<compile_context>
chip_gen: v5e
topology: v5e:2x2
jax: 0.10.0
libtpu: 0.0.40
codegen_flags: <defaults>
</compile_context>

<pallas_src>
import functools

import jax
import jax.numpy as jnp
from jax import lax
from jax.experimental import pallas as pl
from jax.experimental.pallas import tpu as pltpu


def _bilstm_dense_kernel(
    xin_ref,     # (T*8, Kp)   time-major, direction-stacked, bias-indicator input
    w_in_ref,    # (Kp, 4H)    block input->gates weights (+ bias rows), order i,f,o,g
    whh_ref,     # (2H, 4H)    [whh_f ; whh_b] recurrent weights, order i,f,o,g
    wd_f_ref,    # (H, O)      dense rows multiplying the forward hidden
    wd_b_ref,    # (H, O)      dense rows multiplying the backward hidden
    bd_ref,      # (1, O)      dense bias
    out_ref,     # (T*8, O)    rows 8*t + b (b < batch) are the valid outputs
    xg_buf,      # scratch VMEM (T, 8, 4H) f32 : hoisted gate pre-activations
    hf_buf,      # scratch VMEM (T, 8, H)  f32 : hf_buf[t, 0:B]  = h_fwd(t)
    hb_buf,      # scratch VMEM (T, 8, H)  f32 : hb_buf[t, B:2B] = h_bwd(t)
    *,
    batch: int,
):
    wdt = whh_ref.dtype                      # matmul operand dtype (bf16 or f32)
    H = wd_f_ref.shape[0]
    T, R, G = xg_buf.shape                   # R = 8 sublane-aligned rows per step

    # ---- 1) Hoisted input projection (+ folded biases): one MXU matmul, stored
    #         to VMEM scratch so the unrolled recurrence only does aligned loads.
    xg_all = jnp.dot(xin_ref[...], w_in_ref[...],
                     preferred_element_type=jnp.float32)        # (T*8, 4H) f32
    xg_buf[...] = xg_all.reshape(T, R, G)

    # Row masks selecting forward rows (0:B) / backward rows (B:2B) for the
    # block-structured recurrent matmul.  Padding rows stay exactly zero.
    row = lax.broadcasted_iota(jnp.int32, (R, 1), 0)
    mf = (row < batch).astype(jnp.float32)
    mb = jnp.logical_and(row >= batch, row < 2 * batch).astype(jnp.float32)

    # ---- 2) Interleaved fwd/bwd recurrence, fully unrolled (T small + static).
    h = jnp.zeros((R, H), jnp.float32)
    c = jnp.zeros((R, H), jnp.float32)
    for s in range(T):
        # block-diag recurrent matmul: fwd rows see whh_f, bwd rows see whh_b
        h_ext = jnp.concatenate([h * mf, h * mb], axis=1).astype(wdt)   # (R, 2H)
        g = xg_buf[s] + jnp.dot(h_ext, whh_ref[...],
                                preferred_element_type=jnp.float32)     # (R, 4H)
        sig = jax.nn.sigmoid(g[:, 0:3 * H])        # i, f, o in one EUP map
        i_g = sig[:, 0:H]
        f_g = sig[:, H:2 * H]
        o_g = sig[:, 2 * H:3 * H]
        g_g = jnp.tanh(g[:, 3 * H:4 * H])
        c = f_g * c + i_g * g_g
        h = o_g * jnp.tanh(c)
        # Off-chain aligned stores; fwd half is time s, bwd half is time T-1-s.
        hf_buf[s] = h
        hb_buf[T - 1 - s] = h

    # ---- 3) Dense head, hoisted: two (T*8, H) @ (H, O) matmuls over the scratch
    #         slabs, one sublane shift to align bwd rows, a single store.
    Hf = hf_buf[...].reshape(T * R, H).astype(wd_f_ref.dtype)
    Hb = hb_buf[...].reshape(T * R, H).astype(wd_b_ref.dtype)
    of = jnp.dot(Hf, wd_f_ref[...], preferred_element_type=jnp.float32)
    ob = jnp.dot(Hb, wd_b_ref[...], preferred_element_type=jnp.float32)
    # bwd contributions live at rows 8*t + batch + b; shift down by `batch`.
    ob = jnp.concatenate([ob[batch:, :], ob[:batch, :]], axis=0)
    out_ref[...] = (of + ob + bd_ref[...].astype(jnp.float32)).astype(out_ref.dtype)


def lstm_bidir_dense(x, params, *, weights_dtype=jnp.bfloat16):
    """Bidirectional LSTM (batch_first) + Linear(2H -> 32).

    x: (B, T, D) float32, returns (B, T, 32) float32.
    weights_dtype: jnp.bfloat16 (default, MXU fast path; fp32 accumulation and
      fp32 h/c state) or jnp.float32 for exact fp32 semantics.
    """
    B, T, D = x.shape
    H = params["whh_f"].shape[0]
    O = params["wd_f"].shape[1]
    R = 8                                    # sublane-aligned rows per timestep
    assert 2 * B <= R, "this layout assumes 2*batch <= 8"

    def reorder(w):                          # gate order i,f,g,o -> i,f,o,g
        return jnp.concatenate(
            [w[..., 0:H], w[..., H:2 * H], w[..., 3 * H:4 * H], w[..., 2 * H:3 * H]],
            axis=-1)

    wih_f = reorder(params["wih_f"])         # (D, 4H)
    wih_b = reorder(params["wih_b"])
    whh = jnp.concatenate([reorder(params["whh_f"]),
                           reorder(params["whh_b"])], axis=0)       # (2H, 4H)
    b_f = reorder(params["b_f"])[0]          # (4H,)
    b_b = reorder(params["b_b"])[0]

    # Block input weights: rows 0:D apply to fwd x, D:2D to bwd x, rows 2D / 2D+1
    # are the fwd/bwd combined biases (selected via indicator columns). Padded to
    # a lane-multiple K so the MXU sees an aligned contraction.
    Kp = ((2 * D + 2 + 127) // 128) * 128
    w_in = jnp.zeros((Kp, 4 * H), jnp.float32)
    w_in = w_in.at[0:D].set(wih_f).at[D:2 * D].set(wih_b)
    w_in = w_in.at[2 * D].set(b_f).at[2 * D + 1].set(b_b)

    # Time-major, direction-stacked, 8-row-aligned input blocks (built in XLA,
    # tiny): step s rows 0:B = x[:, s], rows B:2B = x[:, T-1-s], rest zero.
    xf = jnp.transpose(x, (1, 0, 2))                       # (T, B, D)
    xb = jnp.transpose(x[:, ::-1, :], (1, 0, 2))           # (T, B, D)
    xin = jnp.zeros((T, R, Kp), jnp.float32)
    xin = xin.at[:, 0:B, 0:D].set(xf)
    xin = xin.at[:, B:2 * B, D:2 * D].set(xb)
    xin = xin.at[:, 0:B, 2 * D].set(1.0)
    xin = xin.at[:, B:2 * B, 2 * D + 1].set(1.0)
    xin = xin.reshape(T * R, Kp)

    args = (
        xin.astype(weights_dtype),
        w_in.astype(weights_dtype),
        whh.astype(weights_dtype),
        params["wd_f"].astype(weights_dtype),
        params["wd_b"].astype(weights_dtype),
        params["bd"].astype(jnp.float32),
    )

    vmem = pl.BlockSpec(memory_space=pltpu.MemorySpace.VMEM)
    kernel = functools.partial(_bilstm_dense_kernel, batch=B)
    out_full = pl.pallas_call(
        kernel,
        out_shape=jax.ShapeDtypeStruct((T * R, O), jnp.float32),
        in_specs=[vmem] * len(args),
        out_specs=vmem,
        scratch_shapes=[
            pltpu.VMEM((T, R, 4 * H), jnp.float32),   # xg_buf
            pltpu.VMEM((T, R, H), jnp.float32),       # hf_buf
            pltpu.VMEM((T, R, H), jnp.float32),       # hb_buf
        ],
        # Resident footprint is ~3 MiB (f32) / ~1.7 MiB (bf16); modest limit.
        compiler_params=pltpu.CompilerParams(vmem_limit_bytes=16 << 20),
    )(*args)

    # rows 8*t + b (b < B) hold output[b, t, :]
    return out_full.reshape(T, R, O)[:, :B, :].transpose(1, 0, 2)


def init_params(key, in_features=32, lstm_units=256):
    """Deterministic synthetic parameters matching nn.LSTM / nn.Linear shapes,
    stored pre-transposed for right-multiplication inside the kernel."""
    D, H = in_features, lstm_units
    ks = jax.random.split(key, 10)
    s = 0.1
    return {
        # nn.LSTM weight_ih_l0 is (4H, D); we keep (D, 4H) = its transpose.
        "wih_f": s * jax.random.normal(ks[0], (D, 4 * H), jnp.float32),
        "whh_f": s * jax.random.normal(ks[1], (H, 4 * H), jnp.float32),
        "b_f":   s * jax.random.normal(ks[2], (1, 4 * H), jnp.float32),  # b_ih + b_hh
        "wih_b": s * jax.random.normal(ks[3], (D, 4 * H), jnp.float32),
        "whh_b": s * jax.random.normal(ks[4], (H, 4 * H), jnp.float32),
        "b_b":   s * jax.random.normal(ks[5], (1, 4 * H), jnp.float32),
        # nn.Linear(2H, 32) weight is (32, 2H); transposed and split into the
        # block multiplying the fwd hidden and the block for the bwd hidden.
        "wd_f":  s * jax.random.normal(ks[6], (H, 32), jnp.float32),
        "wd_b":  s * jax.random.normal(ks[7], (H, 32), jnp.float32),
        "bd":    s * jax.random.normal(ks[8], (1, 32), jnp.float32),
    }


def reference_forward(x, p):
    """Pure-JAX reference mirroring torch.nn.LSTM(bidirectional) + nn.Linear."""
    B, T, _ = x.shape
    H = p["whh_f"].shape[0]

    def run_direction(wih, whh, b, reverse):
        h = jnp.zeros((B, H), jnp.float32)
        c = jnp.zeros((B, H), jnp.float32)
        outs = [None] * T
        ts = range(T - 1, -1, -1) if reverse else range(T)
        for t in ts:
            g = x[:, t, :] @ wih + h @ whh + b
            i_g = jax.nn.sigmoid(g[:, :H])
            f_g = jax.nn.sigmoid(g[:, H:2 * H])
            g_g = jnp.tanh(g[:, 2 * H:3 * H])
            o_g = jax.nn.sigmoid(g[:, 3 * H:])
            c = f_g * c + i_g * g_g
            h = o_g * jnp.tanh(c)
            outs[t] = h
        return jnp.stack(outs, axis=1)  # (B, T, H)

    hf = run_direction(p["wih_f"], p["whh_f"], p["b_f"], reverse=False)
    hb = run_direction(p["wih_b"], p["whh_b"], p["b_b"], reverse=True)
    return hf @ p["wd_f"] + hb @ p["wd_b"] + p["bd"]


if __name__ == "__main__":
    key = jax.random.PRNGKey(0)
    k_x, k_p = jax.random.split(key)

    B, T, D, H = 2, 8, 32, 256  # module defaults: in_features=32, lstm_units=256
    x = jax.random.normal(k_x, (B, T, D), jnp.float32)
    params = init_params(k_p, in_features=D, lstm_units=H)

    ref = reference_forward(x, params)

    # Exact-semantics fp32 path (tight tolerance).
    f32_fwd = jax.jit(functools.partial(lstm_bidir_dense, weights_dtype=jnp.float32))
    out_f32 = jax.block_until_ready(f32_fwd(x, params))
    assert out_f32.shape == (B, T, 32), out_f32.shape
    assert jnp.allclose(out_f32, ref, rtol=1e-4, atol=1e-4), \
        float(jnp.max(jnp.abs(out_f32 - ref)))

    # Default bf16-operand fast path (v6e/v7x MXU), fp32 accumulation/state.
    out_bf16 = jax.block_until_ready(jax.jit(lstm_bidir_dense)(x, params))
    assert out_bf16.shape == (B, T, 32), out_bf16.shape
    assert jnp.allclose(out_bf16, ref, rtol=1e-1, atol=1e-1), \
        float(jnp.max(jnp.abs(out_bf16 - ref)))

    print("KERNEL_OK")
</pallas_src>

<mosaic_0001>
module attributes {stable_mosaic.version = 11 : i64} {
  func.func @_bilstm_dense_kernel(%arg0: memref<64x128xf32, #tpu.memory_space<vmem>>, %arg1: memref<128x1024xf32, #tpu.memory_space<vmem>>, %arg2: memref<512x1024xf32, #tpu.memory_space<vmem>>, %arg3: memref<256x32xf32, #tpu.memory_space<vmem>>, %arg4: memref<256x32xf32, #tpu.memory_space<vmem>>, %arg5: memref<1x32xf32, #tpu.memory_space<vmem>>, %arg6: memref<64x32xf32, #tpu.memory_space<vmem>>, %arg7: memref<8x8x1024xf32, #tpu.memory_space<vmem>>, %arg8: memref<8x8x256xf32, #tpu.memory_space<vmem>>, %arg9: memref<8x8x256xf32, #tpu.memory_space<vmem>>) attributes {dimension_semantics = [], scalar_prefetch = 0 : i64, scratch_operands = 3 : i64, tpu.core_type = #tpu.core_type<tc>} {
    %c0 = arith.constant 0 : index
    %c0_0 = arith.constant 0 : index
    %0 = vector.load %arg0[%c0, %c0_0] : memref<64x128xf32, #tpu.memory_space<vmem>>, vector<64x128xf32>
    %c0_1 = arith.constant 0 : index
    %c0_2 = arith.constant 0 : index
    %1 = vector.load %arg1[%c0_1, %c0_2] : memref<128x1024xf32, #tpu.memory_space<vmem>>, vector<128x1024xf32>
    %cst = arith.constant dense<0.000000e+00> : vector<64x1024xf32>
    %2 = tpu.matmul %0, %1, %cst {dimension_numbers = #tpu.dot_dimension_numbers<[1], [0], [0], [1], [0, 0, 1, 1], [], []>} : vector<64x128xf32>, vector<128x1024xf32>, vector<64x1024xf32> -> vector<64x1024xf32>
    %3 = vector.shape_cast %2 : vector<64x1024xf32> to vector<8x8x1024xf32>
    %c0_3 = arith.constant 0 : index
    %c0_4 = arith.constant 0 : index
    %c0_5 = arith.constant 0 : index
    %4 = vector.load %arg7[%c0_3, %c0_4, %c0_5] : memref<8x8x1024xf32, #tpu.memory_space<vmem>>, vector<8x8x1024xf32>
    tpu.vector_store %arg7[%c0_3, %c0_4, %c0_5], %3 {strides = array<i32>} : memref<8x8x1024xf32, #tpu.memory_space<vmem>>, vector<8x8x1024xf32>,
    %5 = tpu.iota {dimensions = array<i32: 0>} : vector<8x1xi32>
    %c2_i32 = arith.constant 2 : i32
    %6 = vector.broadcast %c2_i32 : i32 to vector<8x1xi32>
    %7 = arith.cmpi slt, %5, %6 : vector<8x1xi32>
    %8 = arith.extui %7 : vector<8x1xi1> to vector<8x1xi32>
    %9 = arith.sitofp %8 : vector<8x1xi32> to vector<8x1xf32>
    %c2_i32_6 = arith.constant 2 : i32
    %10 = vector.broadcast %c2_i32_6 : i32 to vector<8x1xi32>
    %11 = arith.cmpi sge, %5, %10 : vector<8x1xi32>
    %c4_i32 = arith.constant 4 : i32
    %12 = vector.broadcast %c4_i32 : i32 to vector<8x1xi32>
    %13 = arith.cmpi slt, %5, %12 : vector<8x1xi32>
    %14 = arith.andi %11, %13 : vector<8x1xi1>
    %15 = arith.extui %14 : vector<8x1xi1> to vector<8x1xi32>
    %16 = arith.sitofp %15 : vector<8x1xi32> to vector<8x1xf32>
    %cst_7 = arith.constant 0.000000e+00 : f32
    %17 = vector.broadcast %cst_7 : f32 to vector<8x256xf32>
    %cst_8 = arith.constant 0.000000e+00 : f32
    %18 = vector.broadcast %cst_8 : f32 to vector<8x256xf32>
    %19 = vector.broadcast %9 : vector<8x1xf32> to vector<8x256xf32>
    %20 = arith.mulf %17, %19 : vector<8x256xf32>
    %21 = vector.broadcast %16 : vector<8x1xf32> to vector<8x256xf32>
    %22 = arith.mulf %17, %21 : vector<8x256xf32>
    %23 = tpu.concatenate %20, %22 in 1 : vector<8x256xf32>, vector<8x256xf32> -> vector<8x512xf32>
    %c0_9 = arith.constant 0 : index
    %c0_10 = arith.constant 0 : index
    %c0_11 = arith.constant 0 : index
    %24 = vector.load %arg7[%c0_9, %c0_10, %c0_11] : memref<8x8x1024xf32, #tpu.memory_space<vmem>>, vector<1x8x1024xf32>
    %25 = vector.shape_cast %24 : vector<1x8x1024xf32> to vector<8x1024xf32>
    %c0_12 = arith.constant 0 : index
    %c0_13 = arith.constant 0 : index
    %26 = vector.load %arg2[%c0_12, %c0_13] : memref<512x1024xf32, #tpu.memory_space<vmem>>, vector<512x1024xf32>
    %cst_14 = arith.constant dense<0.000000e+00> : vector<8x1024xf32>
    %27 = tpu.matmul %23, %26, %cst_14 {dimension_numbers = #tpu.dot_dimension_numbers<[1], [0], [0], [1], [0, 0, 1, 1], [], []>} : vector<8x512xf32>, vector<512x1024xf32>, vector<8x1024xf32> -> vector<8x1024xf32>
    %28 = arith.addf %25, %27 : vector<8x1024xf32>
    %29 = vector.extract_strided_slice %28 {offsets = [0, 0], sizes = [8, 768], strides = [1, 1]} : vector<8x1024xf32> to vector<8x768xf32>
    %30 = arith.negf %29 : vector<8x768xf32>
    %31 = math.exp %30 : vector<8x768xf32>
    %cst_15 = arith.constant 1.000000e+00 : f32
    %32 = vector.broadcast %cst_15 : f32 to vector<8x768xf32>
    %33 = arith.addf %32, %31 : vector<8x768xf32>
    %34 = arith.divf %32, %33 : vector<8x768xf32>
    %35 = vector.extract_strided_slice %34 {offsets = [0, 0], sizes = [8, 256], strides = [1, 1]} : vector<8x768xf32> to vector<8x256xf32>
    %36 = vector.extract_strided_slice %34 {offsets = [0, 256], sizes = [8, 256], strides = [1, 1]} : vector<8x768xf32> to vector<8x256xf32>
    %37 = vector.extract_strided_slice %34 {offsets = [0, 512], sizes = [8, 256], strides = [1, 1]} : vector<8x768xf32> to vector<8x256xf32>
    %38 = vector.extract_strided_slice %28 {offsets = [0, 768], sizes = [8, 256], strides = [1, 1]} : vector<8x1024xf32> to vector<8x256xf32>
    %39 = math.tanh %38 : vector<8x256xf32>
    %40 = arith.mulf %36, %18 : vector<8x256xf32>
    %41 = arith.mulf %35, %39 : vector<8x256xf32>
    %42 = arith.addf %40, %41 : vector<8x256xf32>
    %43 = math.tanh %42 : vector<8x256xf32>
    %44 = arith.mulf %37, %43 : vector<8x256xf32>
    %c0_16 = arith.constant 0 : index
    %c0_17 = arith.constant 0 : index
    %c0_18 = arith.constant 0 : index
    %45 = vector.load %arg8[%c0_16, %c0_17, %c0_18] : memref<8x8x256xf32, #tpu.memory_space<vmem>>, vector<1x8x256xf32>
    %46 = vector.shape_cast %45 : vector<1x8x256xf32> to vector<8x256xf32>
    %47 = vector.shape_cast %44 : vector<8x256xf32> to vector<1x8x256xf32>
    tpu.vector_store %arg8[%c0_16, %c0_17, %c0_18], %47 {strides = array<i32>} : memref<8x8x256xf32, #tpu.memory_space<vmem>>, vector<1x8x256xf32>,
    %c7 = arith.constant 7 : index
    %c0_19 = arith.constant 0 : index
    %c0_20 = arith.constant 0 : index
    %48 = vector.load %arg9[%c7, %c0_19, %c0_20] : memref<8x8x256xf32, #tpu.memory_space<vmem>>, vector<1x8x256xf32>
    %49 = vector.shape_cast %48 : vector<1x8x256xf32> to vector<8x256xf32>
    %50 = vector.shape_cast %44 : vector<8x256xf32> to vector<1x8x256xf32>
    tpu.vector_store %arg9[%c7, %c0_19, %c0_20], %50 {strides = array<i32>} : memref<8x8x256xf32, #tpu.memory_space<vmem>>, vector<1x8x256xf32>,
    %51 = vector.broadcast %9 : vector<8x1xf32> to vector<8x256xf32>
    %52 = arith.mulf %44, %51 : vector<8x256xf32>
    %53 = vector.broadcast %16 : vector<8x1xf32> to vector<8x256xf32>
    %54 = arith.mulf %44, %53 : vector<8x256xf32>
    %55 = tpu.concatenate %52, %54 in 1 : vector<8x256xf32>, vector<8x256xf32> -> vector<8x512xf32>
    %c1 = arith.constant 1 : index
    %c0_21 = arith.constant 0 : index
    %c0_22 = arith.constant 0 : index
    %56 = vector.load %arg7[%c1, %c0_21, %c0_22] : memref<8x8x1024xf32, #tpu.memory_space<vmem>>, vector<1x8x1024xf32>
    %57 = vector.shape_cast %56 : vector<1x8x1024xf32> to vector<8x1024xf32>
    %c0_23 = arith.constant 0 : index
    %c0_24 = arith.constant 0 : index
    %58 = vector.load %arg2[%c0_23, %c0_24] : memref<512x1024xf32, #tpu.memory_space<vmem>>, vector<512x1024xf32>
    %cst_25 = arith.constant dense<0.000000e+00> : vector<8x1024xf32>
    %59 = tpu.matmul %55, %58, %cst_25 {dimension_numbers = #tpu.dot_dimension_numbers<[1], [0], [0], [1], [0, 0, 1, 1], [], []>} : vector<8x512xf32>, vector<512x1024xf32>, vector<8x1024xf32> -> vector<8x1024xf32>
    %60 = arith.addf %57, %59 : vector<8x1024xf32>
    %61 = vector.extract_strided_slice %60 {offsets = [0, 0], sizes = [8, 768], strides = [1, 1]} : vector<8x1024xf32> to vector<8x768xf32>
    %62 = arith.negf %61 : vector<8x768xf32>
    %63 = math.exp %62 : vector<8x768xf32>
    %cst_26 = arith.constant 1.000000e+00 : f32
    %64 = vector.broadcast %cst_26 : f32 to vector<8x768xf32>
    %65 = arith.addf %64, %63 : vector<8x768xf32>
    %66 = arith.divf %64, %65 : vector<8x768xf32>
    %67 = vector.extract_strided_slice %66 {offsets = [0, 0], sizes = [8, 256], strides = [1, 1]} : vector<8x768xf32> to vector<8x256xf32>
    %68 = vector.extract_strided_slice %66 {offsets = [0, 256], sizes = [8, 256], strides = [1, 1]} : vector<8x768xf32> to vector<8x256xf32>
    %69 = vector.extract_strided_slice %66 {offsets = [0, 512], sizes = [8, 256], strides = [1, 1]} : vector<8x768xf32> to vector<8x256xf32>
    %70 = vector.extract_strided_slice %60 {offsets = [0, 768], sizes = [8, 256], strides = [1, 1]} : vector<8x1024xf32> to vector<8x256xf32>
    %71 = math.tanh %70 : vector<8x256xf32>
    %72 = arith.mulf %68, %42 : vector<8x256xf32>
    %73 = arith.mulf %67, %71 : vector<8x256xf32>
    %74 = arith.addf %72, %73 : vector<8x256xf32>
    %75 = math.tanh %74 : vector<8x256xf32>
    %76 = arith.mulf %69, %75 : vector<8x256xf32>
    %c1_27 = arith.constant 1 : index
    %c0_28 = arith.constant 0 : index
    %c0_29 = arith.constant 0 : index
    %77 = vector.load %arg8[%c1_27, %c0_28, %c0_29] : memref<8x8x256xf32, #tpu.memory_space<vmem>>, vector<1x8x256xf32>
    %78 = vector.shape_cast %77 : vector<1x8x256xf32> to vector<8x256xf32>
    %79 = vector.shape_cast %76 : vector<8x256xf32> to vector<1x8x256xf32>
    tpu.vector_store %arg8[%c1_27, %c0_28, %c0_29], %79 {strides = array<i32>} : memref<8x8x256xf32, #tpu.memory_space<vmem>>, vector<1x8x256xf32>,
    %c6 = arith.constant 6 : index
    %c0_30 = arith.constant 0 : index
    %c0_31 = arith.constant 0 : index
    %80 = vector.load %arg9[%c6, %c0_30, %c0_31] : memref<8x8x256xf32, #tpu.memory_space<vmem>>, vector<1x8x256xf32>
    %81 = vector.shape_cast %80 : vector<1x8x256xf32> to vector<8x256xf32>
    %82 = vector.shape_cast %76 : vector<8x256xf32> to vector<1x8x256xf32>
    tpu.vector_store %arg9[%c6, %c0_30, %c0_31], %82 {strides = array<i32>} : memref<8x8x256xf32, #tpu.memory_space<vmem>>, vector<1x8x256xf32>,
    %83 = vector.broadcast %9 : vector<8x1xf32> to vector<8x256xf32>
    %84 = arith.mulf %76, %83 : vector<8x256xf32>
    %85 = vector.broadcast %16 : vector<8x1xf32> to vector<8x256xf32>
    %86 = arith.mulf %76, %85 : vector<8x256xf32>
    %87 = tpu.concatenate %84, %86 in 1 : vector<8x256xf32>, vector<8x256xf32> -> vector<8x512xf32>
    %c2 = arith.constant 2 : index
    %c0_32 = arith.constant 0 : index
    %c0_33 = arith.constant 0 : index
    %88 = vector.load %arg7[%c2, %c0_32, %c0_33] : memref<8x8x1024xf32, #tpu.memory_space<vmem>>, vector<1x8x1024xf32>
    %89 = vector.shape_cast %88 : vector<1x8x1024xf32> to vector<8x1024xf32>
    %c0_34 = arith.constant 0 : index
    %c0_35 = arith.constant 0 : index
    %90 = vector.load %arg2[%c0_34, %c0_35] : memref<512x1024xf32, #tpu.memory_space<vmem>>, vector<512x1024xf32>
    %cst_36 = arith.constant dense<0.000000e+00> : vector<8x1024xf32>
    %91 = tpu.matmul %87, %90, %cst_36 {dimension_numbers = #tpu.dot_dimension_numbers<[1], [0], [0], [1], [0, 0, 1, 1], [], []>} : vector<8x512xf32>, vector<512x1024xf32>, vector<8x1024xf32> -> vector<8x1024xf32>
    %92 = arith.addf %89, %91 : vector<8x1024xf32>
    %93 = vector.extract_strided_slice %92 {offsets = [0, 0], sizes = [8, 768], strides = [1, 1]} : vector<8x1024xf32> to vector<8x768xf32>
    %94 = arith.negf %93 : vector<8x768xf32>
    %95 = math.exp %94 : vector<8x768xf32>
    %cst_37 = arith.constant 1.000000e+00 : f32
    %96 = vector.broadcast %cst_37 : f32 to vector<8x768xf32>
    %97 = arith.addf %96, %95 : vector<8x768xf32>
    %98 = arith.divf %96, %97 : vector<8x768xf32>
    %99 = vector.extract_strided_slice %98 {offsets = [0, 0], sizes = [8, 256], strides = [1, 1]} : vector<8x768xf32> to vector<8x256xf32>
    %100 = vector.extract_strided_slice %98 {offsets = [0, 256], sizes = [8, 256], strides = [1, 1]} : vector<8x768xf32> to vector<8x256xf32>
    %101 = vector.extract_strided_slice %98 {offsets = [0, 512], sizes = [8, 256], strides = [1, 1]} : vector<8x768xf32> to vector<8x256xf32>
    %102 = vector.extract_strided_slice %92 {offsets = [0, 768], sizes = [8, 256], strides = [1, 1]} : vector<8x1024xf32> to vector<8x256xf32>
    %103 = math.tanh %102 : vector<8x256xf32>
    %104 = arith.mulf %100, %74 : vector<8x256xf32>
    %105 = arith.mulf %99, %103 : vector<8x256xf32>
    %106 = arith.addf %104, %105 : vector<8x256xf32>
    %107 = math.tanh %106 : vector<8x256xf32>
    %108 = arith.mulf %101, %107 : vector<8x256xf32>
    %c2_38 = arith.constant 2 : index
    %c0_39 = arith.constant 0 : index
    %c0_40 = arith.constant 0 : index
    %109 = vector.load %arg8[%c2_38, %c0_39, %c0_40] : memref<8x8x256xf32, #tpu.memory_space<vmem>>, vector<1x8x256xf32>
    %110 = vector.shape_cast %109 : vector<1x8x256xf32> to vector<8x256xf32>
    %111 = vector.shape_cast %108 : vector<8x256xf32> to vector<1x8x256xf32>
    tpu.vector_store %arg8[%c2_38, %c0_39, %c0_40], %111 {strides = array<i32>} : memref<8x8x256xf32, #tpu.memory_space<vmem>>, vector<1x8x256xf32>,
    %c5 = arith.constant 5 : index
    %c0_41 = arith.constant 0 : index
    %c0_42 = arith.constant 0 : index
    %112 = vector.load %arg9[%c5, %c0_41, %c0_42] : memref<8x8x256xf32, #tpu.memory_space<vmem>>, vector<1x8x256xf32>
    %113 = vector.shape_cast %112 : vector<1x8x256xf32> to vector<8x256xf32>
    %114 = vector.shape_cast %108 : vector<8x256xf32> to vector<1x8x256xf32>
    tpu.vector_store %arg9[%c5, %c0_41, %c0_42], %114 {strides = array<i32>} : memref<8x8x256xf32, #tpu.memory_space<vmem>>, vector<1x8x256xf32>,
    %115 = vector.broadcast %9 : vector<8x1xf32> to vector<8x256xf32>
    %116 = arith.mulf %108, %115 : vector<8x256xf32>
    %117 = vector.broadcast %16 : vector<8x1xf32> to vector<8x256xf32>
    %118 = arith.mulf %108, %117 : vector<8x256xf32>
    %119 = tpu.concatenate %116, %118 in 1 : vector<8x256xf32>, vector<8x256xf32> -> vector<8x512xf32>
    %c3 = arith.constant 3 : index
    %c0_43 = arith.constant 0 : index
    %c0_44 = arith.constant 0 : index
    %120 = vector.load %arg7[%c3, %c0_43, %c0_44] : memref<8x8x1024xf32, #tpu.memory_space<vmem>>, vector<1x8x1024xf32>
    %121 = vector.shape_cast %120 : vector<1x8x1024xf32> to vector<8x1024xf32>
    %c0_45 = arith.constant 0 : index
    %c0_46 = arith.constant 0 : index
    %122 = vector.load %arg2[%c0_45, %c0_46] : memref<512x1024xf32, #tpu.memory_space<vmem>>, vector<512x1024xf32>
    %cst_47 = arith.constant dense<0.000000e+00> : vector<8x1024xf32>
    %123 = tpu.matmul %119, %122, %cst_47 {dimension_numbers = #tpu.dot_dimension_numbers<[1], [0], [0], [1], [0, 0, 1, 1], [], []>} : vector<8x512xf32>, vector<512x1024xf32>, vector<8x1024xf32> -> vector<8x1024xf32>
    %124 = arith.addf %121, %123 : vector<8x1024xf32>
    %125 = vector.extract_strided_slice %124 {offsets = [0, 0], sizes = [8, 768], strides = [1, 1]} : vector<8x1024xf32> to vector<8x768xf32>
    %126 = arith.negf %125 : vector<8x768xf32>
    %127 = math.exp %126 : vector<8x768xf32>
    %cst_48 = arith.constant 1.000000e+00 : f32
    %128 = vector.broadcast %cst_48 : f32 to vector<8x768xf32>
    %129 = arith.addf %128, %127 : vector<8x768xf32>
    %130 = arith.divf %128, %129 : vector<8x768xf32>
    %131 = vector.extract_strided_slice %130 {offsets = [0, 0], sizes = [8, 256], strides = [1, 1]} : vector<8x768xf32> to vector<8x256xf32>
    %132 = vector.extract_strided_slice %130 {offsets = [0, 256], sizes = [8, 256], strides = [1, 1]} : vector<8x768xf32> to vector<8x256xf32>
    %133 = vector.extract_strided_slice %130 {offsets = [0, 512], sizes = [8, 256], strides = [1, 1]} : vector<8x768xf32> to vector<8x256xf32>
    %134 = vector.extract_strided_slice %124 {offsets = [0, 768], sizes = [8, 256], strides = [1, 1]} : vector<8x1024xf32> to vector<8x256xf32>
    %135 = math.tanh %134 : vector<8x256xf32>
    %136 = arith.mulf %132, %106 : vector<8x256xf32>
    %137 = arith.mulf %131, %135 : vector<8x256xf32>
    %138 = arith.addf %136, %137 : vector<8x256xf32>
    %139 = math.tanh %138 : vector<8x256xf32>
    %140 = arith.mulf %133, %139 : vector<8x256xf32>
    %c3_49 = arith.constant 3 : index
    %c0_50 = arith.constant 0 : index
    %c0_51 = arith.constant 0 : index
    %141 = vector.load %arg8[%c3_49, %c0_50, %c0_51] : memref<8x8x256xf32, #tpu.memory_space<vmem>>, vector<1x8x256xf32>
    %142 = vector.shape_cast %141 : vector<1x8x256xf32> to vector<8x256xf32>
    %143 = vector.shape_cast %140 : vector<8x256xf32> to vector<1x8x256xf32>
    tpu.vector_store %arg8[%c3_49, %c0_50, %c0_51], %143 {strides = array<i32>} : memref<8x8x256xf32, #tpu.memory_space<vmem>>, vector<1x8x256xf32>,
    %c4 = arith.constant 4 : index
    %c0_52 = arith.constant 0 : index
    %c0_53 = arith.constant 0 : index
    %144 = vector.load %arg9[%c4, %c0_52, %c0_53] : memref<8x8x256xf32, #tpu.memory_space<vmem>>, vector<1x8x256xf32>
    %145 = vector.shape_cast %144 : vector<1x8x256xf32> to vector<8x256xf32>
    %146 = vector.shape_cast %140 : vector<8x256xf32> to vector<1x8x256xf32>
    tpu.vector_store %arg9[%c4, %c0_52, %c0_53], %146 {strides = array<i32>} : memref<8x8x256xf32, #tpu.memory_space<vmem>>, vector<1x8x256xf32>,
    %147 = vector.broadcast %9 : vector<8x1xf32> to vector<8x256xf32>
    %148 = arith.mulf %140, %147 : vector<8x256xf32>
    %149 = vector.broadcast %16 : vector<8x1xf32> to vector<8x256xf32>
    %150 = arith.mulf %140, %149 : vector<8x256xf32>
    %151 = tpu.concatenate %148, %150 in 1 : vector<8x256xf32>, vector<8x256xf32> -> vector<8x512xf32>
    %c4_54 = arith.constant 4 : index
    %c0_55 = arith.constant 0 : index
    %c0_56 = arith.constant 0 : index
    %152 = vector.load %arg7[%c4_54, %c0_55, %c0_56] : memref<8x8x1024xf32, #tpu.memory_space<vmem>>, vector<1x8x1024xf32>
    %153 = vector.shape_cast %152 : vector<1x8x1024xf32> to vector<8x1024xf32>
    %c0_57 = arith.constant 0 : index
    %c0_58 = arith.constant 0 : index
    %154 = vector.load %arg2[%c0_57, %c0_58] : memref<512x1024xf32, #tpu.memory_space<vmem>>, vector<512x1024xf32>
    %cst_59 = arith.constant dense<0.000000e+00> : vector<8x1024xf32>
    %155 = tpu.matmul %151, %154, %cst_59 {dimension_numbers = #tpu.dot_dimension_numbers<[1], [0], [0], [1], [0, 0, 1, 1], [], []>} : vector<8x512xf32>, vector<512x1024xf32>, vector<8x1024xf32> -> vector<8x1024xf32>
    %156 = arith.addf %153, %155 : vector<8x1024xf32>
    %157 = vector.extract_strided_slice %156 {offsets = [0, 0], sizes = [8, 768], strides = [1, 1]} : vector<8x1024xf32> to vector<8x768xf32>
    %158 = arith.negf %157 : vector<8x768xf32>
    %159 = math.exp %158 : vector<8x768xf32>
    %cst_60 = arith.constant 1.000000e+00 : f32
    %160 = vector.broadcast %cst_60 : f32 to vector<8x768xf32>
    %161 = arith.addf %160, %159 : vector<8x768xf32>
    %162 = arith.divf %160, %161 : vector<8x768xf32>
    %163 = vector.extract_strided_slice %162 {offsets = [0, 0], sizes = [8, 256], strides = [1, 1]} : vector<8x768xf32> to vector<8x256xf32>
    %164 = vector.extract_strided_slice %162 {offsets = [0, 256], sizes = [8, 256], strides = [1, 1]} : vector<8x768xf32> to vector<8x256xf32>
    %165 = vector.extract_strided_slice %162 {offsets = [0, 512], sizes = [8, 256], strides = [1, 1]} : vector<8x768xf32> to vector<8x256xf32>
    %166 = vector.extract_strided_slice %156 {offsets = [0, 768], sizes = [8, 256], strides = [1, 1]} : vector<8x1024xf32> to vector<8x256xf32>
    %167 = math.tanh %166 : vector<8x256xf32>
    %168 = arith.mulf %164, %138 : vector<8x256xf32>
    %169 = arith.mulf %163, %167 : vector<8x256xf32>
    %170 = arith.addf %168, %169 : vector<8x256xf32>
    %171 = math.tanh %170 : vector<8x256xf32>
    %172 = arith.mulf %165, %171 : vector<8x256xf32>
    %c4_61 = arith.constant 4 : index
    %c0_62 = arith.constant 0 : index
    %c0_63 = arith.constant 0 : index
    %173 = vector.load %arg8[%c4_61, %c0_62, %c0_63] : memref<8x8x256xf32, #tpu.memory_space<vmem>>, vector<1x8x256xf32>
    %174 = vector.shape_cast %173 : vector<1x8x256xf32> to vector<8x256xf32>
    %175 = vector.shape_cast %172 : vector<8x256xf32> to vector<1x8x256xf32>
    tpu.vector_store %arg8[%c4_61, %c0_62, %c0_63], %175 {strides = array<i32>} : memref<8x8x256xf32, #tpu.memory_space<vmem>>, vector<1x8x256xf32>,
    %c3_64 = arith.constant 3 : index
    %c0_65 = arith.constant 0 : index
    %c0_66 = arith.constant 0 : index
    %176 = vector.load %arg9[%c3_64, %c0_65, %c0_66] : memref<8x8x256xf32, #tpu.memory_space<vmem>>, vector<1x8x256xf32>
    %177 = vector.shape_cast %176 : vector<1x8x256xf32> to vector<8x256xf32>
    %178 = vector.shape_cast %172 : vector<8x256xf32> to vector<1x8x256xf32>
    tpu.vector_store %arg9[%c3_64, %c0_65, %c0_66], %178 {strides = array<i32>} : memref<8x8x256xf32, #tpu.memory_space<vmem>>, vector<1x8x256xf32>,
    %179 = vector.broadcast %9 : vector<8x1xf32> to vector<8x256xf32>
    %180 = arith.mulf %172, %179 : vector<8x256xf32>
    %181 = vector.broadcast %16 : vector<8x1xf32> to vector<8x256xf32>
    %182 = arith.mulf %172, %181 : vector<8x256xf32>
    %183 = tpu.concatenate %180, %182 in 1 : vector<8x256xf32>, vector<8x256xf32> -> vector<8x512xf32>
    %c5_67 = arith.constant 5 : index
    %c0_68 = arith.constant 0 : index
    %c0_69 = arith.constant 0 : index
    %184 = vector.load %arg7[%c5_67, %c0_68, %c0_69] : memref<8x8x1024xf32, #tpu.memory_space<vmem>>, vector<1x8x1024xf32>
    %185 = vector.shape_cast %184 : vector<1x8x1024xf32> to vector<8x1024xf32>
    %c0_70 = arith.constant 0 : index
    %c0_71 = arith.constant 0 : index
    %186 = vector.load %arg2[%c0_70, %c0_71] : memref<512x1024xf32, #tpu.memory_space<vmem>>, vector<512x1024xf32>
    %cst_72 = arith.constant dense<0.000000e+00> : vector<8x1024xf32>
    %187 = tpu.matmul %183, %186, %cst_72 {dimension_numbers = #tpu.dot_dimension_numbers<[1], [0], [0], [1], [0, 0, 1, 1], [], []>} : vector<8x512xf32>, vector<512x1024xf32>, vector<8x1024xf32> -> vector<8x1024xf32>
    %188 = arith.addf %185, %187 : vector<8x1024xf32>
    %189 = vector.extract_strided_slice %188 {offsets = [0, 0], sizes = [8, 768], strides = [1, 1]} : vector<8x1024xf32> to vector<8x768xf32>
    %190 = arith.negf %189 : vector<8x768xf32>
    %191 = math.exp %190 : vector<8x768xf32>
    %cst_73 = arith.constant 1.000000e+00 : f32
    %192 = vector.broadcast %cst_73 : f32 to vector<8x768xf32>
    %193 = arith.addf %192, %191 : vector<8x768xf32>
    %194 = arith.divf %192, %193 : vector<8x768xf32>
    %195 = vector.extract_strided_slice %194 {offsets = [0, 0], sizes = [8, 256], strides = [1, 1]} : vector<8x768xf32> to vector<8x256xf32>
    %196 = vector.extract_strided_slice %194 {offsets = [0, 256], sizes = [8, 256], strides = [1, 1]} : vector<8x768xf32> to vector<8x256xf32>
    %197 = vector.extract_strided_slice %194 {offsets = [0, 512], sizes = [8, 256], strides = [1, 1]} : vector<8x768xf32> to vector<8x256xf32>
    %198 = vector.extract_strided_slice %188 {offsets = [0, 768], sizes = [8, 256], strides = [1, 1]} : vector<8x1024xf32> to vector<8x256xf32>
    %199 = math.tanh %198 : vector<8x256xf32>
    %200 = arith.mulf %196, %170 : vector<8x256xf32>
    %201 = arith.mulf %195, %199 : vector<8x256xf32>
    %202 = arith.addf %200, %201 : vector<8x256xf32>
    %203 = math.tanh %202 : vector<8x256xf32>
    %204 = arith.mulf %197, %203 : vector<8x256xf32>
    %c5_74 = arith.constant 5 : index
    %c0_75 = arith.constant 0 : index
    %c0_76 = arith.constant 0 : index
    %205 = vector.load %arg8[%c5_74, %c0_75, %c0_76] : memref<8x8x256xf32, #tpu.memory_space<vmem>>, vector<1x8x256xf32>
    %206 = vector.shape_cast %205 : vector<1x8x256xf32> to vector<8x256xf32>
    %207 = vector.shape_cast %204 : vector<8x256xf32> to vector<1x8x256xf32>
    tpu.vector_store %arg8[%c5_74, %c0_75, %c0_76], %207 {strides = array<i32>} : memref<8x8x256xf32, #tpu.memory_space<vmem>>, vector<1x8x256xf32>,
    %c2_77 = arith.constant 2 : index
    %c0_78 = arith.constant 0 : index
    %c0_79 = arith.constant 0 : index
    %208 = vector.load %arg9[%c2_77, %c0_78, %c0_79] : memref<8x8x256xf32, #tpu.memory_space<vmem>>, vector<1x8x256xf32>
    %209 = vector.shape_cast %208 : vector<1x8x256xf32> to vector<8x256xf32>
    %210 = vector.shape_cast %204 : vector<8x256xf32> to vector<1x8x256xf32>
    tpu.vector_store %arg9[%c2_77, %c0_78, %c0_79], %210 {strides = array<i32>} : memref<8x8x256xf32, #tpu.memory_space<vmem>>, vector<1x8x256xf32>,
    %211 = vector.broadcast %9 : vector<8x1xf32> to vector<8x256xf32>
    %212 = arith.mulf %204, %211 : vector<8x256xf32>
    %213 = vector.broadcast %16 : vector<8x1xf32> to vector<8x256xf32>
    %214 = arith.mulf %204, %213 : vector<8x256xf32>
    %215 = tpu.concatenate %212, %214 in 1 : vector<8x256xf32>, vector<8x256xf32> -> vector<8x512xf32>
    %c6_80 = arith.constant 6 : index
    %c0_81 = arith.constant 0 : index
    %c0_82 = arith.constant 0 : index
    %216 = vector.load %arg7[%c6_80, %c0_81, %c0_82] : memref<8x8x1024xf32, #tpu.memory_space<vmem>>, vector<1x8x1024xf32>
    %217 = vector.shape_cast %216 : vector<1x8x1024xf32> to vector<8x1024xf32>
    %c0_83 = arith.constant 0 : index
    %c0_84 = arith.constant 0 : index
    %218 = vector.load %arg2[%c0_83, %c0_84] : memref<512x1024xf32, #tpu.memory_space<vmem>>, vector<512x1024xf32>
    %cst_85 = arith.constant dense<0.000000e+00> : vector<8x1024xf32>
    %219 = tpu.matmul %215, %218, %cst_85 {dimension_numbers = #tpu.dot_dimension_numbers<[1], [0], [0], [1], [0, 0, 1, 1], [], []>} : vector<8x512xf32>, vector<512x1024xf32>, vector<8x1024xf32> -> vector<8x1024xf32>
    %220 = arith.addf %217, %219 : vector<8x1024xf32>
    %221 = vector.extract_strided_slice %220 {offsets = [0, 0], sizes = [8, 768], strides = [1, 1]} : vector<8x1024xf32> to vector<8x768xf32>
    %222 = arith.negf %221 : vector<8x768xf32>
    %223 = math.exp %222 : vector<8x768xf32>
    %cst_86 = arith.constant 1.000000e+00 : f32
    %224 = vector.broadcast %cst_86 : f32 to vector<8x768xf32>
    %225 = arith.addf %224, %223 : vector<8x768xf32>
    %226 = arith.divf %224, %225 : vector<8x768xf32>
    %227 = vector.extract_strided_slice %226 {offsets = [0, 0], sizes = [8, 256], strides = [1, 1]} : vector<8x768xf32> to vector<8x256xf32>
    %228 = vector.extract_strided_slice %226 {offsets = [0, 256], sizes = [8, 256], strides = [1, 1]} : vector<8x768xf32> to vector<8x256xf32>
    %229 = vector.extract_strided_slice %226 {offsets = [0, 512], sizes = [8, 256], strides = [1, 1]} : vector<8x768xf32> to vector<8x256xf32>
    %230 = vector.extract_strided_slice %220 {offsets = [0, 768], sizes = [8, 256], strides = [1, 1]} : vector<8x1024xf32> to vector<8x256xf32>
    %231 = math.tanh %230 : vector<8x256xf32>
    %232 = arith.mulf %228, %202 : vector<8x256xf32>
    %233 = arith.mulf %227, %231 : vector<8x256xf32>
    %234 = arith.addf %232, %233 : vector<8x256xf32>
    %235 = math.tanh %234 : vector<8x256xf32>
    %236 = arith.mulf %229, %235 : vector<8x256xf32>
    %c6_87 = arith.constant 6 : index
    %c0_88 = arith.constant 0 : index
    %c0_89 = arith.constant 0 : index
    %237 = vector.load %arg8[%c6_87, %c0_88, %c0_89] : memref<8x8x256xf32, #tpu.memory_space<vmem>>, vector<1x8x256xf32>
    %238 = vector.shape_cast %237 : vector<1x8x256xf32> to vector<8x256xf32>
    %239 = vector.shape_cast %236 : vector<8x256xf32> to vector<1x8x256xf32>
    tpu.vector_store %arg8[%c6_87, %c0_88, %c0_89], %239 {strides = array<i32>} : memref<8x8x256xf32, #tpu.memory_space<vmem>>, vector<1x8x256xf32>,
    %c1_90 = arith.constant 1 : index
    %c0_91 = arith.constant 0 : index
    %c0_92 = arith.constant 0 : index
    %240 = vector.load %arg9[%c1_90, %c0_91, %c0_92] : memref<8x8x256xf32, #tpu.memory_space<vmem>>, vector<1x8x256xf32>
    %241 = vector.shape_cast %240 : vector<1x8x256xf32> to vector<8x256xf32>
    %242 = vector.shape_cast %236 : vector<8x256xf32> to vector<1x8x256xf32>
    tpu.vector_store %arg9[%c1_90, %c0_91, %c0_92], %242 {strides = array<i32>} : memref<8x8x256xf32, #tpu.memory_space<vmem>>, vector<1x8x256xf32>,
    %243 = vector.broadcast %9 : vector<8x1xf32> to vector<8x256xf32>
    %244 = arith.mulf %236, %243 : vector<8x256xf32>
    %245 = vector.broadcast %16 : vector<8x1xf32> to vector<8x256xf32>
    %246 = arith.mulf %236, %245 : vector<8x256xf32>
    %247 = tpu.concatenate %244, %246 in 1 : vector<8x256xf32>, vector<8x256xf32> -> vector<8x512xf32>
    %c7_93 = arith.constant 7 : index
    %c0_94 = arith.constant 0 : index
    %c0_95 = arith.constant 0 : index
    %248 = vector.load %arg7[%c7_93, %c0_94, %c0_95] : memref<8x8x1024xf32, #tpu.memory_space<vmem>>, vector<1x8x1024xf32>
    %249 = vector.shape_cast %248 : vector<1x8x1024xf32> to vector<8x1024xf32>
    %c0_96 = arith.constant 0 : index
    %c0_97 = arith.constant 0 : index
    %250 = vector.load %arg2[%c0_96, %c0_97] : memref<512x1024xf32, #tpu.memory_space<vmem>>, vector<512x1024xf32>
    %cst_98 = arith.constant dense<0.000000e+00> : vector<8x1024xf32>
    %251 = tpu.matmul %247, %250, %cst_98 {dimension_numbers = #tpu.dot_dimension_numbers<[1], [0], [0], [1], [0, 0, 1, 1], [], []>} : vector<8x512xf32>, vector<512x1024xf32>, vector<8x1024xf32> -> vector<8x1024xf32>
    %252 = arith.addf %249, %251 : vector<8x1024xf32>
    %253 = vector.extract_strided_slice %252 {offsets = [0, 0], sizes = [8, 768], strides = [1, 1]} : vector<8x1024xf32> to vector<8x768xf32>
    %254 = arith.negf %253 : vector<8x768xf32>
    %255 = math.exp %254 : vector<8x768xf32>
    %cst_99 = arith.constant 1.000000e+00 : f32
    %256 = vector.broadcast %cst_99 : f32 to vector<8x768xf32>
    %257 = arith.addf %256, %255 : vector<8x768xf32>
    %258 = arith.divf %256, %257 : vector<8x768xf32>
    %259 = vector.extract_strided_slice %258 {offsets = [0, 0], sizes = [8, 256], strides = [1, 1]} : vector<8x768xf32> to vector<8x256xf32>
    %260 = vector.extract_strided_slice %258 {offsets = [0, 256], sizes = [8, 256], strides = [1, 1]} : vector<8x768xf32> to vector<8x256xf32>
    %261 = vector.extract_strided_slice %258 {offsets = [0, 512], sizes = [8, 256], strides = [1, 1]} : vector<8x768xf32> to vector<8x256xf32>
    %262 = vector.extract_strided_slice %252 {offsets = [0, 768], sizes = [8, 256], strides = [1, 1]} : vector<8x1024xf32> to vector<8x256xf32>
    %263 = math.tanh %262 : vector<8x256xf32>
    %264 = arith.mulf %260, %234 : vector<8x256xf32>
    %265 = arith.mulf %259, %263 : vector<8x256xf32>
    %266 = arith.addf %264, %265 : vector<8x256xf32>
    %267 = math.tanh %266 : vector<8x256xf32>
    %268 = arith.mulf %261, %267 : vector<8x256xf32>
    %c7_100 = arith.constant 7 : index
    %c0_101 = arith.constant 0 : index
    %c0_102 = arith.constant 0 : index
    %269 = vector.load %arg8[%c7_100, %c0_101, %c0_102] : memref<8x8x256xf32, #tpu.memory_space<vmem>>, vector<1x8x256xf32>
    %270 = vector.shape_cast %269 : vector<1x8x256xf32> to vector<8x256xf32>
    %271 = vector.shape_cast %268 : vector<8x256xf32> to vector<1x8x256xf32>
    tpu.vector_store %arg8[%c7_100, %c0_101, %c0_102], %271 {strides = array<i32>} : memref<8x8x256xf32, #tpu.memory_space<vmem>>, vector<1x8x256xf32>,
    %c0_103 = arith.constant 0 : index
    %c0_104 = arith.constant 0 : index
    %c0_105 = arith.constant 0 : index
    %272 = vector.load %arg9[%c0_103, %c0_104, %c0_105] : memref<8x8x256xf32, #tpu.memory_space<vmem>>, vector<1x8x256xf32>
    %273 = vector.shape_cast %272 : vector<1x8x256xf32> to vector<8x256xf32>
    %274 = vector.shape_cast %268 : vector<8x256xf32> to vector<1x8x256xf32>
    tpu.vector_store %arg9[%c0_103, %c0_104, %c0_105], %274 {strides = array<i32>} : memref<8x8x256xf32, #tpu.memory_space<vmem>>, vector<1x8x256xf32>,
    %c0_106 = arith.constant 0 : index
    %c0_107 = arith.constant 0 : index
    %c0_108 = arith.constant 0 : index
    %275 = vector.load %arg8[%c0_106, %c0_107, %c0_108] : memref<8x8x256xf32, #tpu.memory_space<vmem>>, vector<8x8x256xf32>
    %276 = vector.shape_cast %275 : vector<8x8x256xf32> to vector<64x256xf32>
    %c0_109 = arith.constant 0 : index
    %c0_110 = arith.constant 0 : index
    %c0_111 = arith.constant 0 : index
    %277 = vector.load %arg9[%c0_109, %c0_110, %c0_111] : memref<8x8x256xf32, #tpu.memory_space<vmem>>, vector<8x8x256xf32>
    %278 = vector.shape_cast %277 : vector<8x8x256xf32> to vector<64x256xf32>
    %c0_112 = arith.constant 0 : index
    %c0_113 = arith.constant 0 : index
    %279 = vector.load %arg3[%c0_112, %c0_113] : memref<256x32xf32, #tpu.memory_space<vmem>>, vector<256x32xf32>
    %cst_114 = arith.constant dense<0.000000e+00> : vector<64x32xf32>
    %280 = tpu.matmul %276, %279, %cst_114 {dimension_numbers = #tpu.dot_dimension_numbers<[1], [0], [0], [1], [0, 0, 1, 1], [], []>} : vector<64x256xf32>, vector<256x32xf32>, vector<64x32xf32> -> vector<64x32xf32>
    %c0_115 = arith.constant 0 : index
    %c0_116 = arith.constant 0 : index
    %281 = vector.load %arg4[%c0_115, %c0_116] : memref<256x32xf32, #tpu.memory_space<vmem>>, vector<256x32xf32>
    %cst_117 = arith.constant dense<0.000000e+00> : vector<64x32xf32>
    %282 = tpu.matmul %278, %281, %cst_117 {dimension_numbers = #tpu.dot_dimension_numbers<[1], [0], [0], [1], [0, 0, 1, 1], [], []>} : vector<64x256xf32>, vector<256x32xf32>, vector<64x32xf32> -> vector<64x32xf32>
    %283 = vector.extract_strided_slice %282 {offsets = [2, 0], sizes = [62, 32], strides = [1, 1]} : vector<64x32xf32> to vector<62x32xf32>
    %284 = vector.extract_strided_slice %282 {offsets = [0, 0], sizes = [2, 32], strides = [1, 1]} : vector<64x32xf32> to vector<2x32xf32>
    %285 = tpu.concatenate %283, %284 in 0 : vector<62x32xf32>, vector<2x32xf32> -> vector<64x32xf32>
    %286 = arith.addf %280, %285 : vector<64x32xf32>
    %c0_118 = arith.constant 0 : index
    %c0_119 = arith.constant 0 : index
    %287 = vector.load %arg5[%c0_118, %c0_119] : memref<1x32xf32, #tpu.memory_space<vmem>>, vector<1x32xf32>
    %288 = vector.broadcast %287 : vector<1x32xf32> to vector<64x32xf32>
    %289 = arith.addf %286, %288 : vector<64x32xf32>
    %c0_120 = arith.constant 0 : index
    %c0_121 = arith.constant 0 : index
    %290 = vector.load %arg6[%c0_120, %c0_121] : memref<64x32xf32, #tpu.memory_space<vmem>>, vector<64x32xf32>
    tpu.vector_store %arg6[%c0_120, %c0_121], %289 {strides = array<i32>} : memref<64x32xf32, #tpu.memory_space<vmem>>, vector<64x32xf32>,
    return
  }
}

</mosaic_0001>

<llo_original>
// kernel: lstm_bidir_dense.1
$region0: #{lstm_bidir_dense.1}
  #allocation0 [shape = 'u32[]', space=smem, size = 0x4, offset = 0x4, fixed_abs, tag = 'smem constant byte address 0x4 - core index']
  #allocation1 [shape = 'u32[72,128]{1,0:T(1,128)}', space=vmem, size = 0x9000, scoped, tag = 'internal scratch']
  #allocation2 [shape = 'f32[8,8,1024]{2,1,0:T(8,128)}', space=vmem, size = 0x40000, scoped, tag = 'scratch operand']
  #allocation3 [shape = 'f32[8,8,256]{2,1,0:T(8,128)}', space=vmem, size = 0x10000, scoped, tag = 'scratch operand']
  #allocation4 [shape = 'f32[8,8,256]{2,1,0:T(8,128)}', space=vmem, size = 0x10000, scoped, tag = 'scratch operand']
  %s0 = inlined_call_operand.vmem [shape: f32[64,128], index: 0, kind: input, shape index: {}]
  %s1 = inlined_call_operand.vmem [shape: f32[128,1024], index: 1, kind: input, shape index: {}]
  %s2 = inlined_call_operand.vmem [shape: f32[512,1024], index: 2, kind: input, shape index: {}]
  %s3 = inlined_call_operand.vmem [shape: f32[256,32], index: 3, kind: input, shape index: {}]
  %s4 = inlined_call_operand.vmem [shape: f32[256,32], index: 4, kind: input, shape index: {}]
  %s5 = inlined_call_operand.vmem [shape: f32[1,32], index: 5, kind: input, shape index: {}]
  %s6 = inlined_call_operand.vmem [shape: f32[64,32], index: 6, kind: output, shape index: {}]
  %s7 = sld [smem:[#allocation0]]
  $region34: #{lstm_bidir_dense.1} parent=0
    _
  %s9 = ssub.s32 1, %s7
  %s10 = scalar_select 0, %s9, %s7
  // Predicated region
  $region2: #{lstm_bidir_dense.1} parent=0 // pred_check
    _
  $region3: #{lstm_bidir_dense.1} parent=0 // pred_check_branch
    %12 = sbr.rel (0) target = $region5
  $region4: #{lstm_bidir_dense.1} parent=0 // pred_region
    _
  $region5: #{lstm_bidir_dense.1} parent=0 // pred_fallthru
    _
  // Predicated region
  $region6: #{lstm_bidir_dense.1} parent=0 // pred_check
    _
  $region7: #{lstm_bidir_dense.1} parent=0 // pred_check_branch
    %14 = sbr.rel (0) target = $region9
  $region8: #{lstm_bidir_dense.1} parent=0 // pred_region
    _
  $region9: #{lstm_bidir_dense.1} parent=0 // pred_fallthru
    _
  // Predicated region
  $region10: #{lstm_bidir_dense.1} parent=0 // pred_check
    _
  $region11: #{lstm_bidir_dense.1} parent=0 // pred_check_branch
    %16 = sbr.rel (0) target = $region13
  $region12: #{lstm_bidir_dense.1} parent=0 // pred_region
    _
  $region13: #{lstm_bidir_dense.1} parent=0 // pred_fallthru
    _
  // Predicated region
  $region14: #{lstm_bidir_dense.1} parent=0 // pred_check
    _
  $region15: #{lstm_bidir_dense.1} parent=0 // pred_check_branch
    %18 = sbr.rel (0) target = $region17
  $region16: #{lstm_bidir_dense.1} parent=0 // pred_region
    _
  $region17: #{lstm_bidir_dense.1} parent=0 // pred_fallthru
    _
  // Predicated region
  $region18: #{lstm_bidir_dense.1} parent=0 // pred_check
    _
  $region19: #{lstm_bidir_dense.1} parent=0 // pred_check_branch
    %20 = sbr.rel (0) target = $region21
  $region20: #{lstm_bidir_dense.1} parent=0 // pred_region
    _
  $region21: #{lstm_bidir_dense.1} parent=0 // pred_fallthru
    _
  // Predicated region
  $region22: #{lstm_bidir_dense.1} parent=0 // pred_check
    _
  $region23: #{lstm_bidir_dense.1} parent=0 // pred_check_branch
    %22 = sbr.rel (0) target = $region25
  $region24: #{lstm_bidir_dense.1} parent=0 // pred_region
    _
  $region25: #{lstm_bidir_dense.1} parent=0 // pred_fallthru
    _
  %v23 = vld [vmem:[%s0] sm:$0xff]
  %v24 = vld [vmem:[%s0 + $0x8] sm:$0xff]
  %v25 = vld [vmem:[%s0 + $0x10] sm:$0xff]
  %v26 = vld [vmem:[%s0 + $0x18] sm:$0xff]
  %v27 = vld [vmem:[%s0 + $0x20] sm:$0xff]
  %v28 = vld [vmem:[%s0 + $0x28] sm:$0xff]
  %v29 = vld [vmem:[%s0 + $0x30] sm:$0xff]
  %v30 = vld [vmem:[%s0 + $0x38] sm:$0xff]
  %v31 = vld [vmem:[%s1] sm:$0xff]
  %v32 = vld [vmem:[%s1 + $0x8] sm:$0xff]
  %v33 = vld [vmem:[%s1 + $0x10] sm:$0xff]
  %v34 = vld [vmem:[%s1 + $0x18] sm:$0xff]
  %v35 = vld [vmem:[%s1 + $0x20] sm:$0xff]
  %v36 = vld [vmem:[%s1 + $0x28] sm:$0xff]
  %v37 = vld [vmem:[%s1 + $0x30] sm:$0xff]
  %v38 = vld [vmem:[%s1 + $0x38] sm:$0xff]
  %v39 = vld [vmem:[%s1 + $0x40] sm:$0xff]
  %v40 = vld [vmem:[%s1 + $0x48] sm:$0xff]
  %v41 = vld [vmem:[%s1 + $0x50] sm:$0xff]
  %v42 = vld [vmem:[%s1 + $0x58] sm:$0xff]
  %v43 = vld [vmem:[%s1 + $0x60] sm:$0xff]
  %v44 = vld [vmem:[%s1 + $0x68] sm:$0xff]
  %v45 = vld [vmem:[%s1 + $0x70] sm:$0xff]
  %v46 = vld [vmem:[%s1 + $0x78] sm:$0xff]
  %v47 = vld [vmem:[%s1 + $0x80] sm:$0xff]
  %v48 = vld [vmem:[%s1 + $0x88] sm:$0xff]
  %v49 = vld [vmem:[%s1 + $0x90] sm:$0xff]
  %v50 = vld [vmem:[%s1 + $0x98] sm:$0xff]
  %v51 = vld [vmem:[%s1 + $0xa0] sm:$0xff]
  %v52 = vld [vmem:[%s1 + $0xa8] sm:$0xff]
  %v53 = vld [vmem:[%s1 + $0xb0] sm:$0xff]
  %v54 = vld [vmem:[%s1 + $0xb8] sm:$0xff]
  %v55 = vld [vmem:[%s1 + $0xc0] sm:$0xff]
  %v56 = vld [vmem:[%s1 + $0xc8] sm:$0xff]
  %v57 = vld [vmem:[%s1 + $0xd0] sm:$0xff]
  %v58 = vld [vmem:[%s1 + $0xd8] sm:$0xff]
  %v59 = vld [vmem:[%s1 + $0xe0] sm:$0xff]
  %v60 = vld [vmem:[%s1 + $0xe8] sm:$0xff]
  %v61 = vld [vmem:[%s1 + $0xf0] sm:$0xff]
  %v62 = vld [vmem:[%s1 + $0xf8] sm:$0xff]
  %v63 = vld [vmem:[%s1 + $0x100] sm:$0xff]
  %v64 = vld [vmem:[%s1 + $0x108] sm:$0xff]
  %v65 = vld [vmem:[%s1 + $0x110] sm:$0xff]
  %v66 = vld [vmem:[%s1 + $0x118] sm:$0xff]
  %v67 = vld [vmem:[%s1 + $0x120] sm:$0xff]
  %v68 = vld [vmem:[%s1 + $0x128] sm:$0xff]
  %v69 = vld [vmem:[%s1 + $0x130] sm:$0xff]
  %v70 = vld [vmem:[%s1 + $0x138] sm:$0xff]
  %v71 = vld [vmem:[%s1 + $0x140] sm:$0xff]
  %v72 = vld [vmem:[%s1 + $0x148] sm:$0xff]
  %v73 = vld [vmem:[%s1 + $0x150] sm:$0xff]
  %v74 = vld [vmem:[%s1 + $0x158] sm:$0xff]
  %v75 = vld [vmem:[%s1 + $0x160] sm:$0xff]
  %v76 = vld [vmem:[%s1 + $0x168] sm:$0xff]
  %v77 = vld [vmem:[%s1 + $0x170] sm:$0xff]
  %v78 = vld [vmem:[%s1 + $0x178] sm:$0xff]
  %v79 = vld [vmem:[%s1 + $0x180] sm:$0xff]
  %v80 = vld [vmem:[%s1 + $0x188] sm:$0xff]
  %v81 = vld [vmem:[%s1 + $0x190] sm:$0xff]
  %v82 = vld [vmem:[%s1 + $0x198] sm:$0xff]
  %v83 = vld [vmem:[%s1 + $0x1a0] sm:$0xff]
  %v84 = vld [vmem:[%s1 + $0x1a8] sm:$0xff]
  %v85 = vld [vmem:[%s1 + $0x1b0] sm:$0xff]
  %v86 = vld [vmem:[%s1 + $0x1b8] sm:$0xff]
  %v87 = vld [vmem:[%s1 + $0x1c0] sm:$0xff]
  %v88 = vld [vmem:[%s1 + $0x1c8] sm:$0xff]
  %v89 = vld [vmem:[%s1 + $0x1d0] sm:$0xff]
  %v90 = vld [vmem:[%s1 + $0x1d8] sm:$0xff]
  %v91 = vld [vmem:[%s1 + $0x1e0] sm:$0xff]
  %v92 = vld [vmem:[%s1 + $0x1e8] sm:$0xff]
  %v93 = vld [vmem:[%s1 + $0x1f0] sm:$0xff]
  %v94 = vld [vmem:[%s1 + $0x1f8] sm:$0xff]
  %v95 = vld [vmem:[%s1 + $0x200] sm:$0xff]
  %v96 = vld [vmem:[%s1 + $0x208] sm:$0xff]
  %v97 = vld [vmem:[%s1 + $0x210] sm:$0xff]
  %v98 = vld [vmem:[%s1 + $0x218] sm:$0xff]
  %v99 = vld [vmem:[%s1 + $0x220] sm:$0xff]
  %v100 = vld [vmem:[%s1 + $0x228] sm:$0xff]
  %v101 = vld [vmem:[%s1 + $0x230] sm:$0xff]
  %v102 = vld [vmem:[%s1 + $0x238] sm:$0xff]
  %v103 = vld [vmem:[%s1 + $0x240] sm:$0xff]
  %v104 = vld [vmem:[%s1 + $0x248] sm:$0xff]
  %v105 = vld [vmem:[%s1 + $0x250] sm:$0xff]
  %v106 = vld [vmem:[%s1 + $0x258] sm:$0xff]
  %v107 = vld [vmem:[%s1 + $0x260] sm:$0xff]
  %v108 = vld [vmem:[%s1 + $0x268] sm:$0xff]
  %v109 = vld [vmem:[%s1 + $0x270] sm:$0xff]
  %v110 = vld [vmem:[%s1 + $0x278] sm:$0xff]
  %v111 = vld [vmem:[%s1 + $0x280] sm:$0xff]
  %v112 = vld [vmem:[%s1 + $0x288] sm:$0xff]
  %v113 = vld [vmem:[%s1 + $0x290] sm:$0xff]
  %v114 = vld [vmem:[%s1 + $0x298] sm:$0xff]
  %v115 = vld [vmem:[%s1 + $0x2a0] sm:$0xff]
  %v116 = vld [vmem:[%s1 + $0x2a8] sm:$0xff]
  %v117 = vld [vmem:[%s1 + $0x2b0] sm:$0xff]
  %v118 = vld [vmem:[%s1 + $0x2b8] sm:$0xff]
  %v119 = vld [vmem:[%s1 + $0x2c0] sm:$0xff]
  %v120 = vld [vmem:[%s1 + $0x2c8] sm:$0xff]
  %v121 = vld [vmem:[%s1 + $0x2d0] sm:$0xff]
  %v122 = vld [vmem:[%s1 + $0x2d8] sm:$0xff]
  %v123 = vld [vmem:[%s1 + $0x2e0] sm:$0xff]
  %v124 = vld [vmem:[%s1 + $0x2e8] sm:$0xff]
  %v125 = vld [vmem:[%s1 + $0x2f0] sm:$0xff]
  %v126 = vld [vmem:[%s1 + $0x2f8] sm:$0xff]
  %v127 = vld [vmem:[%s1 + $0x300] sm:$0xff]
  %v128 = vld [vmem:[%s1 + $0x308] sm:$0xff]
  %v129 = vld [vmem:[%s1 + $0x310] sm:$0xff]
  %v130 = vld [vmem:[%s1 + $0x318] sm:$0xff]
  %v131 = vld [vmem:[%s1 + $0x320] sm:$0xff]
  %v132 = vld [vmem:[%s1 + $0x328] sm:$0xff]
  %v133 = vld [vmem:[%s1 + $0x330] sm:$0xff]
  %v134 = vld [vmem:[%s1 + $0x338] sm:$0xff]
  %v135 = vld [vmem:[%s1 + $0x340] sm:$0xff]
  %v136 = vld [vmem:[%s1 + $0x348] sm:$0xff]
  %v137 = vld [vmem:[%s1 + $0x350] sm:$0xff]
  %v138 = vld [vmem:[%s1 + $0x358] sm:$0xff]
  %v139 = vld [vmem:[%s1 + $0x360] sm:$0xff]
  %v140 = vld [vmem:[%s1 + $0x368] sm:$0xff]
  %v141 = vld [vmem:[%s1 + $0x370] sm:$0xff]
  %v142 = vld [vmem:[%s1 + $0x378] sm:$0xff]
  %v143 = vld [vmem:[%s1 + $0x380] sm:$0xff]
  %v144 = vld [vmem:[%s1 + $0x388] sm:$0xff]
  %v145 = vld [vmem:[%s1 + $0x390] sm:$0xff]
  %v146 = vld [vmem:[%s1 + $0x398] sm:$0xff]
  %v147 = vld [vmem:[%s1 + $0x3a0] sm:$0xff]
  %v148 = vld [vmem:[%s1 + $0x3a8] sm:$0xff]
  %v149 = vld [vmem:[%s1 + $0x3b0] sm:$0xff]
  %v150 = vld [vmem:[%s1 + $0x3b8] sm:$0xff]
  %v151 = vld [vmem:[%s1 + $0x3c0] sm:$0xff]
  %v152 = vld [vmem:[%s1 + $0x3c8] sm:$0xff]
  %v153 = vld [vmem:[%s1 + $0x3d0] sm:$0xff]
  %v154 = vld [vmem:[%s1 + $0x3d8] sm:$0xff]
  %v155 = vld [vmem:[%s1 + $0x3e0] sm:$0xff]
  %v156 = vld [vmem:[%s1 + $0x3e8] sm:$0xff]
  %v157 = vld [vmem:[%s1 + $0x3f0] sm:$0xff]
  %v158 = vld [vmem:[%s1 + $0x3f8] sm:$0xff]
  %159 = vmatpush.msra.mxu0 %v151
  %160 = vmatpush.msra.mxu0 %v143
  %161 = vmatpush.msra.mxu0 %v135
  %162 = vmatpush.msra.mxu0 %v127
  %163 = vmatpush.msra.mxu0 %v119
  %164 = vmatpush.msra.mxu0 %v111
  %165 = vmatpush.msra.mxu0 %v103
  %166 = vmatpush.msra.mxu0 %v95
  %167 = vmatpush.msra.mxu0 %v87
  %168 = vmatpush.msra.mxu0 %v79
  %169 = vmatpush.msra.mxu0 %v71
  %170 = vmatpush.msra.mxu0 %v63
  %171 = vmatpush.msra.mxu0 %v55
  %172 = vmatpush.msra.mxu0 %v47
  %173 = vmatpush.msra.mxu0 %v39
  %174 = vmatpush.msra.mxu0 %v31
  %175 = vmatmul.f32.gmra.mxu0 %v23
  %v176 = vpop.f32.mrf.mxu0
  %v177 = vadd.f32 0.0, %v176
  %178 = vmatmul.f32.gmra.mxu0 %v24
  %v179 = vpop.f32.mrf.mxu0
  %v180 = vadd.f32 0.0, %v179
  %181 = vmatmul.f32.gmra.mxu0 %v25
  %v182 = vpop.f32.mrf.mxu0
  %v183 = vadd.f32 0.0, %v182
  %184 = vmatmul.f32.gmra.mxu0 %v26
  %v185 = vpop.f32.mrf.mxu0
  %v186 = vadd.f32 0.0, %v185
  %187 = vmatmul.f32.gmra.mxu0 %v27
  %v188 = vpop.f32.mrf.mxu0
  %v189 = vadd.f32 0.0, %v188
  %190 = vmatmul.f32.gmra.mxu0 %v28
  %v191 = vpop.f32.mrf.mxu0
  %v192 = vadd.f32 0.0, %v191
  %193 = vmatmul.f32.gmra.mxu0 %v29
  %v194 = vpop.f32.mrf.mxu0
  %v195 = vadd.f32 0.0, %v194
  %196 = vmatmul.f32.gmra.mxu0 %v30
  %v197 = vpop.f32.mrf.mxu0
  %v198 = vadd.f32 0.0, %v197
  %199 = vdwg.mxu0
  %200 = vmatpush.msra.mxu0 %v152
  %201 = vmatpush.msra.mxu0 %v144
  %202 = vmatpush.msra.mxu0 %v136
  %203 = vmatpush.msra.mxu0 %v128
  %204 = vmatpush.msra.mxu0 %v120
  %205 = vmatpush.msra.mxu0 %v112
  %206 = vmatpush.msra.mxu0 %v104
  %207 = vmatpush.msra.mxu0 %v96
  %208 = vmatpush.msra.mxu0 %v88
  %209 = vmatpush.msra.mxu0 %v80
  %210 = vmatpush.msra.mxu0 %v72
  %211 = vmatpush.msra.mxu0 %v64
  %212 = vmatpush.msra.mxu0 %v56
  %213 = vmatpush.msra.mxu0 %v48
  %214 = vmatpush.msra.mxu0 %v40
  %215 = vmatpush.msra.mxu0 %v32
  %216 = vmatmul.f32.gmra.mxu0 %v23
  %v217 = vpop.f32.mrf.mxu0
  %v218 = vadd.f32 0.0, %v217
  %219 = vmatmul.f32.gmra.mxu0 %v24
  %v220 = vpop.f32.mrf.mxu0
  %v221 = vadd.f32 0.0, %v220
  %222 = vmatmul.f32.gmra.mxu0 %v25
  %v223 = vpop.f32.mrf.mxu0
  %v224 = vadd.f32 0.0, %v223
  %225 = vmatmul.f32.gmra.mxu0 %v26
  %v226 = vpop.f32.mrf.mxu0
  %v227 = vadd.f32 0.0, %v226
  %228 = vmatmul.f32.gmra.mxu0 %v27
  %v229 = vpop.f32.mrf.mxu0
  %v230 = vadd.f32 0.0, %v229
  %231 = vmatmul.f32.gmra.mxu0 %v28
  %v232 = vpop.f32.mrf.mxu0
  %v233 = vadd.f32 0.0, %v232
  %234 = vmatmul.f32.gmra.mxu0 %v29
  %v235 = vpop.f32.mrf.mxu0
  %v236 = vadd.f32 0.0, %v235
  %237 = vmatmul.f32.gmra.mxu0 %v30
  %v238 = vpop.f32.mrf.mxu0
  %v239 = vadd.f32 0.0, %v238
  %240 = vdwg.mxu0
  %241 = vmatpush.msra.mxu0 %v153
  %242 = vmatpush.msra.mxu0 %v145
  %243 = vmatpush.msra.mxu0 %v137
  %244 = vmatpush.msra.mxu0 %v129
  %245 = vmatpush.msra.mxu0 %v121
  %246 = vmatpush.msra.mxu0 %v113
  %247 = vmatpush.msra.mxu0 %v105
  %248 = vmatpush.msra.mxu0 %v97
  %249 = vmatpush.msra.mxu0 %v89
  %250 = vmatpush.msra.mxu0 %v81
  %251 = vmatpush.msra.mxu0 %v73
  %252 = vmatpush.msra.mxu0 %v65
  %253 = vmatpush.msra.mxu0 %v57
  %254 = vmatpush.msra.mxu0 %v49
  %255 = vmatpush.msra.mxu0 %v41
  %256 = vmatpush.msra.mxu0 %v33
  %257 = vmatmul.f32.gmra.mxu0 %v23
  %v258 = vpop.f32.mrf.mxu0
  %v259 = vadd.f32 0.0, %v258
  %260 = vmatmul.f32.gmra.mxu0 %v24
  %v261 = vpop.f32.mrf.mxu0
  %v262 = vadd.f32 0.0, %v261
  %263 = vmatmul.f32.gmra.mxu0 %v25
  %v264 = vpop.f32.mrf.mxu0
  %v265 = vadd.f32 0.0, %v264
  %266 = vmatmul.f32.gmra.mxu0 %v26
  %v267 = vpop.f32.mrf.mxu0
  %v268 = vadd.f32 0.0, %v267
  %269 = vmatmul.f32.gmra.mxu0 %v27
  %v270 = vpop.f32.mrf.mxu0
  %v271 = vadd.f32 0.0, %v270
  %272 = vmatmul.f32.gmra.mxu0 %v28
  %v273 = vpop.f32.mrf.mxu0
  %v274 = vadd.f32 0.0, %v273
  %275 = vmatmul.f32.gmra.mxu0 %v29
  %v276 = vpop.f32.mrf.mxu0
  %v277 = vadd.f32 0.0, %v276
  %278 = vmatmul.f32.gmra.mxu0 %v30
  %v279 = vpop.f32.mrf.mxu0
  %v280 = vadd.f32 0.0, %v279
  %281 = vdwg.mxu0
  %282 = vmatpush.msra.mxu0 %v154
  %283 = vmatpush.msra.mxu0 %v146
  %284 = vmatpush.msra.mxu0 %v138
  %285 = vmatpush.msra.mxu0 %v130
  %286 = vmatpush.msra.mxu0 %v122
  %287 = vmatpush.msra.mxu0 %v114
  %288 = vmatpush.msra.mxu0 %v106
  %289 = vmatpush.msra.mxu0 %v98
  %290 = vmatpush.msra.mxu0 %v90
  %291 = vmatpush.msra.mxu0 %v82
  %292 = vmatpush.msra.mxu0 %v74
  %293 = vmatpush.msra.mxu0 %v66
  %294 = vmatpush.msra.mxu0 %v58
  %295 = vmatpush.msra.mxu0 %v50
  %296 = vmatpush.msra.mxu0 %v42
  %297 = vmatpush.msra.mxu0 %v34
  %298 = vmatmul.f32.gmra.mxu0 %v23
  %v299 = vpop.f32.mrf.mxu0
  %v300 = vadd.f32 0.0, %v299
  %301 = vmatmul.f32.gmra.mxu0 %v24
  %v302 = vpop.f32.mrf.mxu0
  %v303 = vadd.f32 0.0, %v302
  %304 = vmatmul.f32.gmra.mxu0 %v25
  %v305 = vpop.f32.mrf.mxu0
  %v306 = vadd.f32 0.0, %v305
  %307 = vmatmul.f32.gmra.mxu0 %v26
  %v308 = vpop.f32.mrf.mxu0
  %v309 = vadd.f32 0.0, %v308
  %310 = vmatmul.f32.gmra.mxu0 %v27
  %v311 = vpop.f32.mrf.mxu0
  %v312 = vadd.f32 0.0, %v311
  %313 = vmatmul.f32.gmra.mxu0 %v28
  %v314 = vpop.f32.mrf.mxu0
  %v315 = vadd.f32 0.0, %v314
  %316 = vmatmul.f32.gmra.mxu0 %v29
  %v317 = vpop.f32.mrf.mxu0
  %v318 = vadd.f32 0.0, %v317
  %319 = vmatmul.f32.gmra.mxu0 %v30
  %v320 = vpop.f32.mrf.mxu0
  %v321 = vadd.f32 0.0, %v320
  %322 = vdwg.mxu0
  %323 = vmatpush.msra.mxu0 %v155
  %324 = vmatpush.msra.mxu0 %v147
  %325 = vmatpush.msra.mxu0 %v139
  %326 = vmatpush.msra.mxu0 %v131
  %327 = vmatpush.msra.mxu0 %v123
  %328 = vmatpush.msra.mxu0 %v115
  %329 = vmatpush.msra.mxu0 %v107
  %330 = vmatpush.msra.mxu0 %v99
  %331 = vmatpush.msra.mxu0 %v91
  %332 = vmatpush.msra.mxu0 %v83
  %333 = vmatpush.msra.mxu0 %v75
  %334 = vmatpush.msra.mxu0 %v67
  %335 = vmatpush.msra.mxu0 %v59
  %336 = vmatpush.msra.mxu0 %v51
  %337 = vmatpush.msra.mxu0 %v43
  %338 = vmatpush.msra.mxu0 %v35
  %339 = vmatmul.f32.gmra.mxu0 %v23
  %v340 = vpop.f32.mrf.mxu0
  %v341 = vadd.f32 0.0, %v340
  %342 = vmatmul.f32.gmra.mxu0 %v24
  %v343 = vpop.f32.mrf.mxu0
  %v344 = vadd.f32 0.0, %v343
  %345 = vmatmul.f32.gmra.mxu0 %v25
  %v346 = vpop.f32.mrf.mxu0
  %v347 = vadd.f32 0.0, %v346
  %348 = vmatmul.f32.gmra.mxu0 %v26
  %v349 = vpop.f32.mrf.mxu0
  %v350 = vadd.f32 0.0, %v349
  %351 = vmatmul.f32.gmra.mxu0 %v27
  %v352 = vpop.f32.mrf.mxu0
  %v353 = vadd.f32 0.0, %v352
  %354 = vmatmul.f32.gmra.mxu0 %v28
  %v355 = vpop.f32.mrf.mxu0
  %v356 = vadd.f32 0.0, %v355
  %357 = vmatmul.f32.gmra.mxu0 %v29
  %v358 = vpop.f32.mrf.mxu0
  %v359 = vadd.f32 0.0, %v358
  %360 = vmatmul.f32.gmra.mxu0 %v30
  %v361 = vpop.f32.mrf.mxu0
  %v362 = vadd.f32 0.0, %v361
  %363 = vdwg.mxu0
  %364 = vmatpush.msra.mxu0 %v156
  %365 = vmatpush.msra.mxu0 %v148
  %366 = vmatpush.msra.mxu0 %v140
  %367 = vmatpush.msra.mxu0 %v132
  %368 = vmatpush.msra.mxu0 %v124
  %369 = vmatpush.msra.mxu0 %v116
  %370 = vmatpush.msra.mxu0 %v108
  %371 = vmatpush.msra.mxu0 %v100
  %372 = vmatpush.msra.mxu0 %v92
  %373 = vmatpush.msra.mxu0 %v84
  %374 = vmatpush.msra.mxu0 %v76
  %375 = vmatpush.msra.mxu0 %v68
  %376 = vmatpush.msra.mxu0 %v60
  %377 = vmatpush.msra.mxu0 %v52
  %378 = vmatpush.msra.mxu0 %v44
  %379 = vmatpush.msra.mxu0 %v36
  %380 = vmatmul.f32.gmra.mxu0 %v23
  %v381 = vpop.f32.mrf.mxu0
  %v382 = vadd.f32 0.0, %v381
  %383 = vmatmul.f32.gmra.mxu0 %v24
  %v384 = vpop.f32.mrf.mxu0
  %v385 = vadd.f32 0.0, %v384
  %386 = vmatmul.f32.gmra.mxu0 %v25
  %v387 = vpop.f32.mrf.mxu0
  %v388 = vadd.f32 0.0, %v387
  %389 = vmatmul.f32.gmra.mxu0 %v26
  %v390 = vpop.f32.mrf.mxu0
  %v391 = vadd.f32 0.0, %v390
  %392 = vmatmul.f32.gmra.mxu0 %v27
  %v393 = vpop.f32.mrf.mxu0
  %v394 = vadd.f32 0.0, %v393
  %395 = vmatmul.f32.gmra.mxu0 %v28
  %v396 = vpop.f32.mrf.mxu0
  %v397 = vadd.f32 0.0, %v396
  %398 = vmatmul.f32.gmra.mxu0 %v29
  %v399 = vpop.f32.mrf.mxu0
  %v400 = vadd.f32 0.0, %v399
  %401 = vmatmul.f32.gmra.mxu0 %v30
  %v402 = vpop.f32.mrf.mxu0
  %v403 = vadd.f32 0.0, %v402
  %404 = vdwg.mxu0
  %405 = vmatpush.msra.mxu0 %v157
  %406 = vmatpush.msra.mxu0 %v149
  %407 = vmatpush.msra.mxu0 %v141
  %408 = vmatpush.msra.mxu0 %v133
  %409 = vmatpush.msra.mxu0 %v125
  %410 = vmatpush.msra.mxu0 %v117
  %411 = vmatpush.msra.mxu0 %v109
  %412 = vmatpush.msra.mxu0 %v101
  %413 = vmatpush.msra.mxu0 %v93
  %414 = vmatpush.msra.mxu0 %v85
  %415 = vmatpush.msra.mxu0 %v77
  %416 = vmatpush.msra.mxu0 %v69
  %417 = vmatpush.msra.mxu0 %v61
  %418 = vmatpush.msra.mxu0 %v53
  %419 = vmatpush.msra.mxu0 %v45
  %420 = vmatpush.msra.mxu0 %v37
  %421 = vmatmul.f32.gmra.mxu0 %v23
  %v422 = vpop.f32.mrf.mxu0
  %v423 = vadd.f32 0.0, %v422
  %424 = vmatmul.f32.gmra.mxu0 %v24
  %v425 = vpop.f32.mrf.mxu0
  %v426 = vadd.f32 0.0, %v425
  %427 = vmatmul.f32.gmra.mxu0 %v25
  %v428 = vpop.f32.mrf.mxu0
  %v429 = vadd.f32 0.0, %v428
  %430 = vmatmul.f32.gmra.mxu0 %v26
  %v431 = vpop.f32.mrf.mxu0
  %v432 = vadd.f32 0.0, %v431
  %433 = vmatmul.f32.gmra.mxu0 %v27
  %v434 = vpop.f32.mrf.mxu0
  %v435 = vadd.f32 0.0, %v434
  %436 = vmatmul.f32.gmra.mxu0 %v28
  %v437 = vpop.f32.mrf.mxu0
  %v438 = vadd.f32 0.0, %v437
  %439 = vmatmul.f32.gmra.mxu0 %v29
  %v440 = vpop.f32.mrf.mxu0
  %v441 = vadd.f32 0.0, %v440
  %442 = vmatmul.f32.gmra.mxu0 %v30
  %v443 = vpop.f32.mrf.mxu0
  %v444 = vadd.f32 0.0, %v443
  %445 = vdwg.mxu0
  %446 = vmatpush.msra.mxu0 %v158
  %447 = vmatpush.msra.mxu0 %v150
  %448 = vmatpush.msra.mxu0 %v142
  %449 = vmatpush.msra.mxu0 %v134
  %450 = vmatpush.msra.mxu0 %v126
  %451 = vmatpush.msra.mxu0 %v118
  %452 = vmatpush.msra.mxu0 %v110
  %453 = vmatpush.msra.mxu0 %v102
  %454 = vmatpush.msra.mxu0 %v94
  %455 = vmatpush.msra.mxu0 %v86
  %456 = vmatpush.msra.mxu0 %v78
  %457 = vmatpush.msra.mxu0 %v70
  %458 = vmatpush.msra.mxu0 %v62
  %459 = vmatpush.msra.mxu0 %v54
  %460 = vmatpush.msra.mxu0 %v46
  %461 = vmatpush.msra.mxu0 %v38
  %462 = vmatmul.f32.gmra.mxu0 %v23
  %v463 = vpop.f32.mrf.mxu0
  %v464 = vadd.f32 0.0, %v463
  %465 = vmatmul.f32.gmra.mxu0 %v24
  %v466 = vpop.f32.mrf.mxu0
  %v467 = vadd.f32 0.0, %v466
  %468 = vmatmul.f32.gmra.mxu0 %v25
  %v469 = vpop.f32.mrf.mxu0
  %v470 = vadd.f32 0.0, %v469
  %471 = vmatmul.f32.gmra.mxu0 %v26
  %v472 = vpop.f32.mrf.mxu0
  %v473 = vadd.f32 0.0, %v472
  %474 = vmatmul.f32.gmra.mxu0 %v27
  %v475 = vpop.f32.mrf.mxu0
  %v476 = vadd.f32 0.0, %v475
  %477 = vmatmul.f32.gmra.mxu0 %v28
  %v478 = vpop.f32.mrf.mxu0
  %v479 = vadd.f32 0.0, %v478
  %480 = vmatmul.f32.gmra.mxu0 %v29
  %v481 = vpop.f32.mrf.mxu0
  %v482 = vadd.f32 0.0, %v481
  %483 = vmatmul.f32.gmra.mxu0 %v30
  %v484 = vpop.f32.mrf.mxu0
  %v485 = vadd.f32 0.0, %v484
  %486 = vdwg.mxu0
  %487 = vst [vmem:[#allocation2] sm:$0xff] %v177
  %488 = vst [vmem:[#allocation2 + $0x8] sm:$0xff] %v218
  %489 = vst [vmem:[#allocation2 + $0x10] sm:$0xff] %v259
  %490 = vst [vmem:[#allocation2 + $0x18] sm:$0xff] %v300
  %491 = vst [vmem:[#allocation2 + $0x20] sm:$0xff] %v341
  %492 = vst [vmem:[#allocation2 + $0x28] sm:$0xff] %v382
  %493 = vst [vmem:[#allocation2 + $0x30] sm:$0xff] %v423
  %494 = vst [vmem:[#allocation2 + $0x38] sm:$0xff] %v464
  %495 = vst [vmem:[#allocation2 + $0x40] sm:$0xff] %v180
  %496 = vst [vmem:[#allocation2 + $0x48] sm:$0xff] %v221
  %497 = vst [vmem:[#allocation2 + $0x50] sm:$0xff] %v262
  %498 = vst [vmem:[#allocation2 + $0x58] sm:$0xff] %v303
  %499 = vst [vmem:[#allocation2 + $0x60] sm:$0xff] %v344
  %500 = vst [vmem:[#allocation2 + $0x68] sm:$0xff] %v385
  %501 = vst [vmem:[#allocation2 + $0x70] sm:$0xff] %v426
  %502 = vst [vmem:[#allocation2 + $0x78] sm:$0xff] %v467
  %503 = vst [vmem:[#allocation2 + $0x80] sm:$0xff] %v183
  %504 = vst [vmem:[#allocation2 + $0x88] sm:$0xff] %v224
  %505 = vst [vmem:[#allocation2 + $0x90] sm:$0xff] %v265
  %506 = vst [vmem:[#allocation2 + $0x98] sm:$0xff] %v306
  %507 = vst [vmem:[#allocation2 + $0xa0] sm:$0xff] %v347
  %508 = vst [vmem:[#allocation2 + $0xa8] sm:$0xff] %v388
  %509 = vst [vmem:[#allocation2 + $0xb0] sm:$0xff] %v429
  %510 = vst [vmem:[#allocation2 + $0xb8] sm:$0xff] %v470
  %511 = vst [vmem:[#allocation2 + $0xc0] sm:$0xff] %v186
  %512 = vst [vmem:[#allocation2 + $0xc8] sm:$0xff] %v227
  %513 = vst [vmem:[#allocation2 + $0xd0] sm:$0xff] %v268
  %514 = vst [vmem:[#allocation2 + $0xd8] sm:$0xff] %v309
  %515 = vst [vmem:[#allocation2 + $0xe0] sm:$0xff] %v350
  %516 = vst [vmem:[#allocation2 + $0xe8] sm:$0xff] %v391
  %517 = vst [vmem:[#allocation2 + $0xf0] sm:$0xff] %v432
  %518 = vst [vmem:[#allocation2 + $0xf8] sm:$0xff] %v473
  %519 = vst [vmem:[#allocation2 + $0x100] sm:$0xff] %v189
  %520 = vst [vmem:[#allocation2 + $0x108] sm:$0xff] %v230
  %521 = vst [vmem:[#allocation2 + $0x110] sm:$0xff] %v271
  %522 = vst [vmem:[#allocation2 + $0x118] sm:$0xff] %v312
  %523 = vst [vmem:[#allocation2 + $0x120] sm:$0xff] %v353
  %524 = vst [vmem:[#allocation2 + $0x128] sm:$0xff] %v394
  %525 = vst [vmem:[#allocation2 + $0x130] sm:$0xff] %v435
  %526 = vst [vmem:[#allocation2 + $0x138] sm:$0xff] %v476
  %527 = vst [vmem:[#allocation2 + $0x140] sm:$0xff] %v192
  %528 = vst [vmem:[#allocation2 + $0x148] sm:$0xff] %v233
  %529 = vst [vmem:[#allocation2 + $0x150] sm:$0xff] %v274
  %530 = vst [vmem:[#allocation2 + $0x158] sm:$0xff] %v315
  %531 = vst [vmem:[#allocation2 + $0x160] sm:$0xff] %v356
  %532 = vst [vmem:[#allocation2 + $0x168] sm:$0xff] %v397
  %533 = vst [vmem:[#allocation2 + $0x170] sm:$0xff] %v438
  %534 = vst [vmem:[#allocation2 + $0x178] sm:$0xff] %v479
  %535 = vst [vmem:[#allocation2 + $0x180] sm:$0xff] %v195
  %536 = vst [vmem:[#allocation2 + $0x188] sm:$0xff] %v236
  %537 = vst [vmem:[#allocation2 + $0x190] sm:$0xff] %v277
  %538 = vst [vmem:[#allocation2 + $0x198] sm:$0xff] %v318
  %539 = vst [vmem:[#allocation2 + $0x1a0] sm:$0xff] %v359
  %540 = vst [vmem:[#allocation2 + $0x1a8] sm:$0xff] %v400
  %541 = vst [vmem:[#allocation2 + $0x1b0] sm:$0xff] %v441
  %542 = vst [vmem:[#allocation2 + $0x1b8] sm:$0xff] %v482
  %543 = vst [vmem:[#allocation2 + $0x1c0] sm:$0xff] %v198
  %544 = vst [vmem:[#allocation2 + $0x1c8] sm:$0xff] %v239
  %545 = vst [vmem:[#allocation2 + $0x1d0] sm:$0xff] %v280
  %546 = vst [vmem:[#allocation2 + $0x1d8] sm:$0xff] %v321
  %547 = vst [vmem:[#allocation2 + $0x1e0] sm:$0xff] %v362
  %548 = vst [vmem:[#allocation2 + $0x1e8] sm:$0xff] %v403
  %549 = vst [vmem:[#allocation2 + $0x1f0] sm:$0xff] %v444
  %550 = vst [vmem:[#allocation2 + $0x1f8] sm:$0xff] %v485
  %v551 = vlaneseq
  %v552 = vshrl.u32 %v551, 7
  %vm553 = vcmp.lt.s32.totalorder %v552, 2
  %v554 = vsel %vm553, 1, 0
  %v555 = vcvt.s32.f32 %v554
  %vm556 = vcmp.ge.s32.totalorder %v552, 2
  %vm557 = vcmp.lt.s32.totalorder %v552, 4
  %vm558 = vmand %vm556, %vm557
  %v559 = vsel %vm558, 1, 0
  %v560 = vcvt.s32.f32 %v559
  %v561 = vmul.f32 %v555, 0.0
  %v562 = vmul.f32 %v560, 0.0
  %v563 = vld [vmem:[#allocation2] sm:$0xff]
  %v564 = vld [vmem:[#allocation2 + $0x8] sm:$0xff]
  %v565 = vld [vmem:[#allocation2 + $0x10] sm:$0xff]
  %v566 = vld [vmem:[#allocation2 + $0x18] sm:$0xff]
  %v567 = vld [vmem:[#allocation2 + $0x20] sm:$0xff]
  %v568 = vld [vmem:[#allocation2 + $0x28] sm:$0xff]
  %v569 = vld [vmem:[#allocation2 + $0x30] sm:$0xff]
  %v570 = vld [vmem:[#allocation2 + $0x38] sm:$0xff]
  %v571 = vld [vmem:[%s2] sm:$0xff]
  %v572 = vld [vmem:[%s2 + $0x8] sm:$0xff]
  %v573 = vld [vmem:[%s2 + $0x10] sm:$0xff]
  %v574 = vld [vmem:[%s2 + $0x18] sm:$0xff]
  %v575 = vld [vmem:[%s2 + $0x20] sm:$0xff]
  %v576 = vld [vmem:[%s2 + $0x28] sm:$0xff]
  %v577 = vld [vmem:[%s2 + $0x30] sm:$0xff]
  %v578 = vld [vmem:[%s2 + $0x38] sm:$0xff]
  %v579 = vld [vmem:[%s2 + $0x40] sm:$0xff]
  %v580 = vld [vmem:[%s2 + $0x48] sm:$0xff]
  %v581 = vld [vmem:[%s2 + $0x50] sm:$0xff]
  %v582 = vld [vmem:[%s2 + $0x58] sm:$0xff]
  %v583 = vld [vmem:[%s2 + $0x60] sm:$0xff]
  %v584 = vld [vmem:[%s2 + $0x68] sm:$0xff]
  %v585 = vld [vmem:[%s2 + $0x70] sm:$0xff]
  %v586 = vld [vmem:[%s2 + $0x78] sm:$0xff]
  %v587 = vld [vmem:[%s2 + $0x80] sm:$0xff]
  %v588 = vld [vmem:[%s2 + $0x88] sm:$0xff]
  %v589 = vld [vmem:[%s2 + $0x90] sm:$0xff]
  %v590 = vld [vmem:[%s2 + $0x98] sm:$0xff]
  %v591 = vld [vmem:[%s2 + $0xa0] sm:$0xff]
  %v592 = vld [vmem:[%s2 + $0xa8] sm:$0xff]
  %v593 = vld [vmem:[%s2 + $0xb0] sm:$0xff]
  %v594 = vld [vmem:[%s2 + $0xb8] sm:$0xff]
  %v595 = vld [vmem:[%s2 + $0xc0] sm:$0xff]
  %v596 = vld [vmem:[%s2 + $0xc8] sm:$0xff]
  %v597 = vld [vmem:[%s2 + $0xd0] sm:$0xff]
  %v598 = vld [vmem:[%s2 + $0xd8] sm:$0xff]
  %v599 = vld [vmem:[%s2 + $0xe0] sm:$0xff]
  %v600 = vld [vmem:[%s2 + $0xe8] sm:$0xff]
  %v601 = vld [vmem:[%s2 + $0xf0] sm:$0xff]
  %v602 = vld [vmem:[%s2 + $0xf8] sm:$0xff]
  %v603 = vld [vmem:[%s2 + $0x100] sm:$0xff]
  %v604 = vld [vmem:[%s2 + $0x108] sm:$0xff]
  %v605 = vld [vmem:[%s2 + $0x110] sm:$0xff]
  %v606 = vld [vmem:[%s2 + $0x118] sm:$0xff]
  %v607 = vld [vmem:[%s2 + $0x120] sm:$0xff]
  %v608 = vld [vmem:[%s2 + $0x128] sm:$0xff]
  %v609 = vld [vmem:[%s2 + $0x130] sm:$0xff]
  %v610 = vld [vmem:[%s2 + $0x138] sm:$0xff]
  %v611 = vld [vmem:[%s2 + $0x140] sm:$0xff]
  %v612 = vld [vmem:[%s2 + $0x148] sm:$0xff]
  %v613 = vld [vmem:[%s2 + $0x150] sm:$0xff]
  %v614 = vld [vmem:[%s2 + $0x158] sm:$0xff]
  %v615 = vld [vmem:[%s2 + $0x160] sm:$0xff]
  %v616 = vld [vmem:[%s2 + $0x168] sm:$0xff]
  %v617 = vld [vmem:[%s2 + $0x170] sm:$0xff]
  %v618 = vld [vmem:[%s2 + $0x178] sm:$0xff]
  %v619 = vld [vmem:[%s2 + $0x180] sm:$0xff]
  %v620 = vld [vmem:[%s2 + $0x188] sm:$0xff]
  %v621 = vld [vmem:[%s2 + $0x190] sm:$0xff]
  %v622 = vld [vmem:[%s2 + $0x198] sm:$0xff]
  %v623 = vld [vmem:[%s2 + $0x1a0] sm:$0xff]
  %v624 = vld [vmem:[%s2 + $0x1a8] sm:$0xff]
  %v625 = vld [vmem:[%s2 + $0x1b0] sm:$0xff]
  %v626 = vld [vmem:[%s2 + $0x1b8] sm:$0xff]
  %v627 = vld [vmem:[%s2 + $0x1c0] sm:$0xff]
  %v628 = vld [vmem:[%s2 + $0x1c8] sm:$0xff]
  %v629 = vld [vmem:[%s2 + $0x1d0] sm:$0xff]
  %v630 = vld [vmem:[%s2 + $0x1d8] sm:$0xff]
  %v631 = vld [vmem:[%s2 + $0x1e0] sm:$0xff]
  %v632 = vld [vmem:[%s2 + $0x1e8] sm:$0xff]
  %v633 = vld [vmem:[%s2 + $0x1f0] sm:$0xff]
  %v634 = vld [vmem:[%s2 + $0x1f8] sm:$0xff]
  %v635 = vld [vmem:[%s2 + $0x200] sm:$0xff]
  %v636 = vld [vmem:[%s2 + $0x208] sm:$0xff]
  %v637 = vld [vmem:[%s2 + $0x210] sm:$0xff]
  %v638 = vld [vmem:[%s2 + $0x218] sm:$0xff]
  %v639 = vld [vmem:[%s2 + $0x220] sm:$0xff]
  %v640 = vld [vmem:[%s2 + $0x228] sm:$0xff]
  %v641 = vld [vmem:[%s2 + $0x230] sm:$0xff]
  %v642 = vld [vmem:[%s2 + $0x238] sm:$0xff]
  %v643 = vld [vmem:[%s2 + $0x240] sm:$0xff]
  %v644 = vld [vmem:[%s2 + $0x248] sm:$0xff]
  %v645 = vld [vmem:[%s2 + $0x250] sm:$0xff]
  %v646 = vld [vmem:[%s2 + $0x258] sm:$0xff]
  %v647 = vld [vmem:[%s2 + $0x260] sm:$0xff]
  %v648 = vld [vmem:[%s2 + $0x268] sm:$0xff]
  %v649 = vld [vmem:[%s2 + $0x270] sm:$0xff]
  %v650 = vld [vmem:[%s2 + $0x278] sm:$0xff]
  %v651 = vld [vmem:[%s2 + $0x280] sm:$0xff]
  %v652 = vld [vmem:[%s2 + $0x288] sm:$0xff]
  %v653 = vld [vmem:[%s2 + $0x290] sm:$0xff]
  %v654 = vld [vmem:[%s2 + $0x298] sm:$0xff]
  %v655 = vld [vmem:[%s2 + $0x2a0] sm:$0xff]
  %v656 = vld [vmem:[%s2 + $0x2a8] sm:$0xff]
  %v657 = vld [vmem:[%s2 + $0x2b0] sm:$0xff]
  %v658 = vld [vmem:[%s2 + $0x2b8] sm:$0xff]
  %v659 = vld [vmem:[%s2 + $0x2c0] sm:$0xff]
  %v660 = vld [vmem:[%s2 + $0x2c8] sm:$0xff]
  %v661 = vld [vmem:[%s2 + $0x2d0] sm:$0xff]
  %v662 = vld [vmem:[%s2 + $0x2d8] sm:$0xff]
  %v663 = vld [vmem:[%s2 + $0x2e0] sm:$0xff]
  %v664 = vld [vmem:[%s2 + $0x2e8] sm:$0xff]
  %v665 = vld [vmem:[%s2 + $0x2f0] sm:$0xff]
  %v666 = vld [vmem:[%s2 + $0x2f8] sm:$0xff]
  %v667 = vld [vmem:[%s2 + $0x300] sm:$0xff]
  %v668 = vld [vmem:[%s2 + $0x308] sm:$0xff]
  %v669 = vld [vmem:[%s2 + $0x310] sm:$0xff]
  %v670 = vld [vmem:[%s2 + $0x318] sm:$0xff]
  %v671 = vld [vmem:[%s2 + $0x320] sm:$0xff]
  %v672 = vld [vmem:[%s2 + $0x328] sm:$0xff]
  %v673 = vld [vmem:[%s2 + $0x330] sm:$0xff]
  %v674 = vld [vmem:[%s2 + $0x338] sm:$0xff]
  %v675 = vld [vmem:[%s2 + $0x340] sm:$0xff]
  %v676 = vld [vmem:[%s2 + $0x348] sm:$0xff]
  %v677 = vld [vmem:[%s2 + $0x350] sm:$0xff]
  %v678 = vld [vmem:[%s2 + $0x358] sm:$0xff]
  %v679 = vld [vmem:[%s2 + $0x360] sm:$0xff]
  %v680 = vld [vmem:[%s2 + $0x368] sm:$0xff]
  %v681 = vld [vmem:[%s2 + $0x370] sm:$0xff]
  %v682 = vld [vmem:[%s2 + $0x378] sm:$0xff]
  %v683 = vld [vmem:[%s2 + $0x380] sm:$0xff]
  %v684 = vld [vmem:[%s2 + $0x388] sm:$0xff]
  %v685 = vld [vmem:[%s2 + $0x390] sm:$0xff]
  %v686 = vld [vmem:[%s2 + $0x398] sm:$0xff]
  %v687 = vld [vmem:[%s2 + $0x3a0] sm:$0xff]
  %v688 = vld [vmem:[%s2 + $0x3a8] sm:$0xff]
  %v689 = vld [vmem:[%s2 + $0x3b0] sm:$0xff]
  %v690 = vld [vmem:[%s2 + $0x3b8] sm:$0xff]
  %v691 = vld [vmem:[%s2 + $0x3c0] sm:$0xff]
  %v692 = vld [vmem:[%s2 + $0x3c8] sm:$0xff]
  %v693 = vld [vmem:[%s2 + $0x3d0] sm:$0xff]
  %v694 = vld [vmem:[%s2 + $0x3d8] sm:$0xff]
  %v695 = vld [vmem:[%s2 + $0x3e0] sm:$0xff]
  %v696 = vld [vmem:[%s2 + $0x3e8] sm:$0xff]
  %v697 = vld [vmem:[%s2 + $0x3f0] sm:$0xff]
  %v698 = vld [vmem:[%s2 + $0x3f8] sm:$0xff]
  %v699 = vld [vmem:[%s2 + $0x400] sm:$0xff]
  %v700 = vld [vmem:[%s2 + $0x408] sm:$0xff]
  %v701 = vld [vmem:[%s2 + $0x410] sm:$0xff]
  %v702 = vld [vmem:[%s2 + $0x418] sm:$0xff]
  %v703 = vld [vmem:[%s2 + $0x420] sm:$0xff]
  %v704 = vld [vmem:[%s2 + $0x428] sm:$0xff]
  %v705 = vld [vmem:[%s2 + $0x430] sm:$0xff]
  %v706 = vld [vmem:[%s2 + $0x438] sm:$0xff]
  %v707 = vld [vmem:[%s2 + $0x440] sm:$0xff]
  %v708 = vld [vmem:[%s2 + $0x448] sm:$0xff]
  %v709 = vld [vmem:[%s2 + $0x450] sm:$0xff]
  %v710 = vld [vmem:[%s2 + $0x458] sm:$0xff]
  %v711 = vld [vmem:[%s2 + $0x460] sm:$0xff]
  %v712 = vld [vmem:[%s2 + $0x468] sm:$0xff]
  %v713 = vld [vmem:[%s2 + $0x470] sm:$0xff]
  %v714 = vld [vmem:[%s2 + $0x478] sm:$0xff]
  %v715 = vld [vmem:[%s2 + $0x480] sm:$0xff]
  %v716 = vld [vmem:[%s2 + $0x488] sm:$0xff]
  %v717 = vld [vmem:[%s2 + $0x490] sm:$0xff]
  %v718 = vld [vmem:[%s2 + $0x498] sm:$0xff]
  %v719 = vld [vmem:[%s2 + $0x4a0] sm:$0xff]
  %v720 = vld [vmem:[%s2 + $0x4a8] sm:$0xff]
  %v721 = vld [vmem:[%s2 + $0x4b0] sm:$0xff]
  %v722 = vld [vmem:[%s2 + $0x4b8] sm:$0xff]
  %v723 = vld [vmem:[%s2 + $0x4c0] sm:$0xff]
  %v724 = vld [vmem:[%s2 + $0x4c8] sm:$0xff]
  %v725 = vld [vmem:[%s2 + $0x4d0] sm:$0xff]
  %v726 = vld [vmem:[%s2 + $0x4d8] sm:$0xff]
  %v727 = vld [vmem:[%s2 + $0x4e0] sm:$0xff]
  %v728 = vld [vmem:[%s2 + $0x4e8] sm:$0xff]
  %v729 = vld [vmem:[%s2 + $0x4f0] sm:$0xff]
  %v730 = vld [vmem:[%s2 + $0x4f8] sm:$0xff]
  %v731 = vld [vmem:[%s2 + $0x500] sm:$0xff]
  %v732 = vld [vmem:[%s2 + $0x508] sm:$0xff]
  %v733 = vld [vmem:[%s2 + $0x510] sm:$0xff]
  %v734 = vld [vmem:[%s2 + $0x518] sm:$0xff]
  %v735 = vld [vmem:[%s2 + $0x520] sm:$0xff]
  %v736 = vld [vmem:[%s2 + $0x528] sm:$0xff]
  %v737 = vld [vmem:[%s2 + $0x530] sm:$0xff]
  %v738 = vld [vmem:[%s2 + $0x538] sm:$0xff]
  %v739 = vld [vmem:[%s2 + $0x540] sm:$0xff]
  %v740 = vld [vmem:[%s2 + $0x548] sm:$0xff]
  %v741 = vld [vmem:[%s2 + $0x550] sm:$0xff]
  %v742 = vld [vmem:[%s2 + $0x558] sm:$0xff]
  %v743 = vld [vmem:[%s2 + $0x560] sm:$0xff]
  %v744 = vld [vmem:[%s2 + $0x568] sm:$0xff]
  %v745 = vld [vmem:[%s2 + $0x570] sm:$0xff]
  %v746 = vld [vmem:[%s2 + $0x578] sm:$0xff]
  %v747 = vld [vmem:[%s2 + $0x580] sm:$0xff]
  %v748 = vld [vmem:[%s2 + $0x588] sm:$0xff]
  %v749 = vld [vmem:[%s2 + $0x590] sm:$0xff]
  %v750 = vld [vmem:[%s2 + $0x598] sm:$0xff]
  %v751 = vld [vmem:[%s2 + $0x5a0] sm:$0xff]
  %v752 = vld [vmem:[%s2 + $0x5a8] sm:$0xff]
  %v753 = vld [vmem:[%s2 + $0x5b0] sm:$0xff]
  %v754 = vld [vmem:[%s2 + $0x5b8] sm:$0xff]
  %v755 = vld [vmem:[%s2 + $0x5c0] sm:$0xff]
  %v756 = vld [vmem:[%s2 + $0x5c8] sm:$0xff]
  %v757 = vld [vmem:[%s2 + $0x5d0] sm:$0xff]
  %v758 = vld [vmem:[%s2 + $0x5d8] sm:$0xff]
  %v759 = vld [vmem:[%s2 + $0x5e0] sm:$0xff]
  %v760 = vld [vmem:[%s2 + $0x5e8] sm:$0xff]
  %v761 = vld [vmem:[%s2 + $0x5f0] sm:$0xff]
  %v762 = vld [vmem:[%s2 + $0x5f8] sm:$0xff]
  %v763 = vld [vmem:[%s2 + $0x600] sm:$0xff]
  %v764 = vld [vmem:[%s2 + $0x608] sm:$0xff]
  %v765 = vld [vmem:[%s2 + $0x610] sm:$0xff]
  %v766 = vld [vmem:[%s2 + $0x618] sm:$0xff]
  %v767 = vld [vmem:[%s2 + $0x620] sm:$0xff]
  %v768 = vld [vmem:[%s2 + $0x628] sm:$0xff]
  %v769 = vld [vmem:[%s2 + $0x630] sm:$0xff]
  %v770 = vld [vmem:[%s2 + $0x638] sm:$0xff]
  %v771 = vld [vmem:[%s2 + $0x640] sm:$0xff]
  %v772 = vld [vmem:[%s2 + $0x648] sm:$0xff]
  %v773 = vld [vmem:[%s2 + $0x650] sm:$0xff]
  %v774 = vld [vmem:[%s2 + $0x658] sm:$0xff]
  %v775 = vld [vmem:[%s2 + $0x660] sm:$0xff]
  %v776 = vld [vmem:[%s2 + $0x668] sm:$0xff]
  %v777 = vld [vmem:[%s2 + $0x670] sm:$0xff]
  %v778 = vld [vmem:[%s2 + $0x678] sm:$0xff]
  %v779 = vld [vmem:[%s2 + $0x680] sm:$0xff]
  %v780 = vld [vmem:[%s2 + $0x688] sm:$0xff]
  %v781 = vld [vmem:[%s2 + $0x690] sm:$0xff]
  %v782 = vld [vmem:[%s2 + $0x698] sm:$0xff]
  %v783 = vld [vmem:[%s2 + $0x6a0] sm:$0xff]
  %v784 = vld [vmem:[%s2 + $0x6a8] sm:$0xff]
  %v785 = vld [vmem:[%s2 + $0x6b0] sm:$0xff]
  %v786 = vld [vmem:[%s2 + $0x6b8] sm:$0xff]
  %v787 = vld [vmem:[%s2 + $0x6c0] sm:$0xff]
  %v788 = vld [vmem:[%s2 + $0x6c8] sm:$0xff]
  %v789 = vld [vmem:[%s2 + $0x6d0] sm:$0xff]
  %v790 = vld [vmem:[%s2 + $0x6d8] sm:$0xff]
  %v791 = vld [vmem:[%s2 + $0x6e0] sm:$0xff]
  %v792 = vld [vmem:[%s2 + $0x6e8] sm:$0xff]
  %v793 = vld [vmem:[%s2 + $0x6f0] sm:$0xff]
  %v794 = vld [vmem:[%s2 + $0x6f8] sm:$0xff]
  %v795 = vld [vmem:[%s2 + $0x700] sm:$0xff]
  %v796 = vld [vmem:[%s2 + $0x708] sm:$0xff]
  %v797 = vld [vmem:[%s2 + $0x710] sm:$0xff]
  %v798 = vld [vmem:[%s2 + $0x718] sm:$0xff]
  %v799 = vld [vmem:[%s2 + $0x720] sm:$0xff]
  %v800 = vld [vmem:[%s2 + $0x728] sm:$0xff]
  %v801 = vld [vmem:[%s2 + $0x730] sm:$0xff]
  %v802 = vld [vmem:[%s2 + $0x738] sm:$0xff]
  %v803 = vld [vmem:[%s2 + $0x740] sm:$0xff]
  %v804 = vld [vmem:[%s2 + $0x748] sm:$0xff]
  %v805 = vld [vmem:[%s2 + $0x750] sm:$0xff]
  %v806 = vld [vmem:[%s2 + $0x758] sm:$0xff]
  %v807 = vld [vmem:[%s2 + $0x760] sm:$0xff]
  %v808 = vld [vmem:[%s2 + $0x768] sm:$0xff]
  %v809 = vld [vmem:[%s2 + $0x770] sm:$0xff]
  %v810 = vld [vmem:[%s2 + $0x778] sm:$0xff]
  %v811 = vld [vmem:[%s2 + $0x780] sm:$0xff]
  %v812 = vld [vmem:[%s2 + $0x788] sm:$0xff]
  %v813 = vld [vmem:[%s2 + $0x790] sm:$0xff]
  %v814 = vld [vmem:[%s2 + $0x798] sm:$0xff]
  %v815 = vld [vmem:[%s2 + $0x7a0] sm:$0xff]
  %v816 = vld [vmem:[%s2 + $0x7a8] sm:$0xff]
  %v817 = vld [vmem:[%s2 + $0x7b0] sm:$0xff]
  %v818 = vld [vmem:[%s2 + $0x7b8] sm:$0xff]
  %v819 = vld [vmem:[%s2 + $0x7c0] sm:$0xff]
  %v820 = vld [vmem:[%s2 + $0x7c8] sm:$0xff]
  %v821 = vld [vmem:[%s2 + $0x7d0] sm:$0xff]
  %v822 = vld [vmem:[%s2 + $0x7d8] sm:$0xff]
  %v823 = vld [vmem:[%s2 + $0x7e0] sm:$0xff]
  %v824 = vld [vmem:[%s2 + $0x7e8] sm:$0xff]
  %v825 = vld [vmem:[%s2 + $0x7f0] sm:$0xff]
  %v826 = vld [vmem:[%s2 + $0x7f8] sm:$0xff]
  %v827 = vld [vmem:[%s2 + $0x800] sm:$0xff]
  %v828 = vld [vmem:[%s2 + $0x808] sm:$0xff]
  %v829 = vld [vmem:[%s2 + $0x810] sm:$0xff]
  %v830 = vld [vmem:[%s2 + $0x818] sm:$0xff]
  %v831 = vld [vmem:[%s2 + $0x820] sm:$0xff]
  %v832 = vld [vmem:[%s2 + $0x828] sm:$0xff]
  %v833 = vld [vmem:[%s2 + $0x830] sm:$0xff]
  %v834 = vld [vmem:[%s2 + $0x838] sm:$0xff]
  %v835 = vld [vmem:[%s2 + $0x840] sm:$0xff]
  %v836 = vld [vmem:[%s2 + $0x848] sm:$0xff]
  %v837 = vld [vmem:[%s2 + $0x850] sm:$0xff]
  %v838 = vld [vmem:[%s2 + $0x858] sm:$0xff]
  %v839 = vld [vmem:[%s2 + $0x860] sm:$0xff]
  %v840 = vld [vmem:[%s2 + $0x868] sm:$0xff]
  %v841 = vld [vmem:[%s2 + $0x870] sm:$0xff]
  %v842 = vld [vmem:[%s2 + $0x878] sm:$0xff]
  %v843 = vld [vmem:[%s2 + $0x880] sm:$0xff]
  %v844 = vld [vmem:[%s2 + $0x888] sm:$0xff]
  %v845 = vld [vmem:[%s2 + $0x890] sm:$0xff]
  %v846 = vld [vmem:[%s2 + $0x898] sm:$0xff]
  %v847 = vld [vmem:[%s2 + $0x8a0] sm:$0xff]
  %v848 = vld [vmem:[%s2 + $0x8a8] sm:$0xff]
  %v849 = vld [vmem:[%s2 + $0x8b0] sm:$0xff]
  %v850 = vld [vmem:[%s2 + $0x8b8] sm:$0xff]
  %v851 = vld [vmem:[%s2 + $0x8c0] sm:$0xff]
  %v852 = vld [vmem:[%s2 + $0x8c8] sm:$0xff]
  %v853 = vld [vmem:[%s2 + $0x8d0] sm:$0xff]
  %v854 = vld [vmem:[%s2 + $0x8d8] sm:$0xff]
  %v855 = vld [vmem:[%s2 + $0x8e0] sm:$0xff]
  %v856 = vld [vmem:[%s2 + $0x8e8] sm:$0xff]
  %v857 = vld [vmem:[%s2 + $0x8f0] sm:$0xff]
  %v858 = vld [vmem:[%s2 + $0x8f8] sm:$0xff]
  %v859 = vld [vmem:[%s2 + $0x900] sm:$0xff]
  %v860 = vld [vmem:[%s2 + $0x908] sm:$0xff]
  %v861 = vld [vmem:[%s2 + $0x910] sm:$0xff]
  %v862 = vld [vmem:[%s2 + $0x918] sm:$0xff]
  %v863 = vld [vmem:[%s2 + $0x920] sm:$0xff]
  %v864 = vld [vmem:[%s2 + $0x928] sm:$0xff]
  %v865 = vld [vmem:[%s2 + $0x930] sm:$0xff]
  %v866 = vld [vmem:[%s2 + $0x938] sm:$0xff]
  %v867 = vld [vmem:[%s2 + $0x940] sm:$0xff]
  %v868 = vld [vmem:[%s2 + $0x948] sm:$0xff]
  %v869 = vld [vmem:[%s2 + $0x950] sm:$0xff]
  %v870 = vld [vmem:[%s2 + $0x958] sm:$0xff]
  %v871 = vld [vmem:[%s2 + $0x960] sm:$0xff]
  %v872 = vld [vmem:[%s2 + $0x968] sm:$0xff]
  %v873 = vld [vmem:[%s2 + $0x970] sm:$0xff]
  %v874 = vld [vmem:[%s2 + $0x978] sm:$0xff]
  %v875 = vld [vmem:[%s2 + $0x980] sm:$0xff]
  %v876 = vld [vmem:[%s2 + $0x988] sm:$0xff]
  %v877 = vld [vmem:[%s2 + $0x990] sm:$0xff]
  %v878 = vld [vmem:[%s2 + $0x998] sm:$0xff]
  %v879 = vld [vmem:[%s2 + $0x9a0] sm:$0xff]
  %v880 = vld [vmem:[%s2 + $0x9a8] sm:$0xff]
  %v881 = vld [vmem:[%s2 + $0x9b0] sm:$0xff]
  %v882 = vld [vmem:[%s2 + $0x9b8] sm:$0xff]
  %v883 = vld [vmem:[%s2 + $0x9c0] sm:$0xff]
  %v884 = vld [vmem:[%s2 + $0x9c8] sm:$0xff]
  %v885 = vld [vmem:[%s2 + $0x9d0] sm:$0xff]
  %v886 = vld [vmem:[%s2 + $0x9d8] sm:$0xff]
  %v887 = vld [vmem:[%s2 + $0x9e0] sm:$0xff]
  %v888 = vld [vmem:[%s2 + $0x9e8] sm:$0xff]
  %v889 = vld [vmem:[%s2 + $0x9f0] sm:$0xff]
  %v890 = vld [vmem:[%s2 + $0x9f8] sm:$0xff]
  %v891 = vld [vmem:[%s2 + $0xa00] sm:$0xff]
  %v892 = vld [vmem:[%s2 + $0xa08] sm:$0xff]
  %v893 = vld [vmem:[%s2 + $0xa10] sm:$0xff]
  %v894 = vld [vmem:[%s2 + $0xa18] sm:$0xff]
  %v895 = vld [vmem:[%s2 + $0xa20] sm:$0xff]
  %v896 = vld [vmem:[%s2 + $0xa28] sm:$0xff]
  %v897 = vld [vmem:[%s2 + $0xa30] sm:$0xff]
  %v898 = vld [vmem:[%s2 + $0xa38] sm:$0xff]
  %v899 = vld [vmem:[%s2 + $0xa40] sm:$0xff]
  %v900 = vld [vmem:[%s2 + $0xa48] sm:$0xff]
  %v901 = vld [vmem:[%s2 + $0xa50] sm:$0xff]
  %v902 = vld [vmem:[%s2 + $0xa58] sm:$0xff]
  %v903 = vld [vmem:[%s2 + $0xa60] sm:$0xff]
  %v904 = vld [vmem:[%s2 + $0xa68] sm:$0xff]
  %v905 = vld [vmem:[%s2 + $0xa70] sm:$0xff]
  %v906 = vld [vmem:[%s2 + $0xa78] sm:$0xff]
  %v907 = vld [vmem:[%s2 + $0xa80] sm:$0xff]
  %v908 = vld [vmem:[%s2 + $0xa88] sm:$0xff]
  %v909 = vld [vmem:[%s2 + $0xa90] sm:$0xff]
  %v910 = vld [vmem:[%s2 + $0xa98] sm:$0xff]
  %v911 = vld [vmem:[%s2 + $0xaa0] sm:$0xff]
  %v912 = vld [vmem:[%s2 + $0xaa8] sm:$0xff]
  %v913 = vld [vmem:[%s2 + $0xab0] sm:$0xff]
  %v914 = vld [vmem:[%s2 + $0xab8] sm:$0xff]
  %v915 = vld [vmem:[%s2 + $0xac0] sm:$0xff]
  %v916 = vld [vmem:[%s2 + $0xac8] sm:$0xff]
  %v917 = vld [vmem:[%s2 + $0xad0] sm:$0xff]
  %v918 = vld [vmem:[%s2 + $0xad8] sm:$0xff]
  %v919 = vld [vmem:[%s2 + $0xae0] sm:$0xff]
  %v920 = vld [vmem:[%s2 + $0xae8] sm:$0xff]
  %v921 = vld [vmem:[%s2 + $0xaf0] sm:$0xff]
  %v922 = vld [vmem:[%s2 + $0xaf8] sm:$0xff]
  %v923 = vld [vmem:[%s2 + $0xb00] sm:$0xff]
  %v924 = vld [vmem:[%s2 + $0xb08] sm:$0xff]
  %v925 = vld [vmem:[%s2 + $0xb10] sm:$0xff]
  %v926 = vld [vmem:[%s2 + $0xb18] sm:$0xff]
  %v927 = vld [vmem:[%s2 + $0xb20] sm:$0xff]
  %v928 = vld [vmem:[%s2 + $0xb28] sm:$0xff]
  %v929 = vld [vmem:[%s2 + $0xb30] sm:$0xff]
  %v930 = vld [vmem:[%s2 + $0xb38] sm:$0xff]
  %v931 = vld [vmem:[%s2 + $0xb40] sm:$0xff]
  %v932 = vld [vmem:[%s2 + $0xb48] sm:$0xff]
  %v933 = vld [vmem:[%s2 + $0xb50] sm:$0xff]
  %v934 = vld [vmem:[%s2 + $0xb58] sm:$0xff]
  %v935 = vld [vmem:[%s2 + $0xb60] sm:$0xff]
  %v936 = vld [vmem:[%s2 + $0xb68] sm:$0xff]
  %v937 = vld [vmem:[%s2 + $0xb70] sm:$0xff]
  %v938 = vld [vmem:[%s2 + $0xb78] sm:$0xff]
  %v939 = vld [vmem:[%s2 + $0xb80] sm:$0xff]
  %v940 = vld [vmem:[%s2 + $0xb88] sm:$0xff]
  %v941 = vld [vmem:[%s2 + $0xb90] sm:$0xff]
  %v942 = vld [vmem:[%s2 + $0xb98] sm:$0xff]
  %v943 = vld [vmem:[%s2 + $0xba0] sm:$0xff]
  %v944 = vld [vmem:[%s2 + $0xba8] sm:$0xff]
  %v945 = vld [vmem:[%s2 + $0xbb0] sm:$0xff]
  %v946 = vld [vmem:[%s2 + $0xbb8] sm:$0xff]
  %v947 = vld [vmem:[%s2 + $0xbc0] sm:$0xff]
  %v948 = vld [vmem:[%s2 + $0xbc8] sm:$0xff]
  %v949 = vld [vmem:[%s2 + $0xbd0] sm:$0xff]
  %v950 = vld [vmem:[%s2 + $0xbd8] sm:$0xff]
  %v951 = vld [vmem:[%s2 + $0xbe0] sm:$0xff]
  %v952 = vld [vmem:[%s2 + $0xbe8] sm:$0xff]
  %v953 = vld [vmem:[%s2 + $0xbf0] sm:$0xff]
  %v954 = vld [vmem:[%s2 + $0xbf8] sm:$0xff]
  %v955 = vld [vmem:[%s2 + $0xc00] sm:$0xff]
  %v956 = vld [vmem:[%s2 + $0xc08] sm:$0xff]
  %v957 = vld [vmem:[%s2 + $0xc10] sm:$0xff]
  %v958 = vld [vmem:[%s2 + $0xc18] sm:$0xff]
  %v959 = vld [vmem:[%s2 + $0xc20] sm:$0xff]
  %v960 = vld [vmem:[%s2 + $0xc28] sm:$0xff]
  %v961 = vld [vmem:[%s2 + $0xc30] sm:$0xff]
  %v962 = vld [vmem:[%s2 + $0xc38] sm:$0xff]
  %v963 = vld [vmem:[%s2 + $0xc40] sm:$0xff]
  %v964 = vld [vmem:[%s2 + $0xc48] sm:$0xff]
  %v965 = vld [vmem:[%s2 + $0xc50] sm:$0xff]
  %v966 = vld [vmem:[%s2 + $0xc58] sm:$0xff]
  %v967 = vld [vmem:[%s2 + $0xc60] sm:$0xff]
  %v968 = vld [vmem:[%s2 + $0xc68] sm:$0xff]
  %v969 = vld [vmem:[%s2 + $0xc70] sm:$0xff]
  %v970 = vld [vmem:[%s2 + $0xc78] sm:$0xff]
  %v971 = vld [vmem:[%s2 + $0xc80] sm:$0xff]
  %v972 = vld [vmem:[%s2 + $0xc88] sm:$0xff]
  %v973 = vld [vmem:[%s2 + $0xc90] sm:$0xff]
  %v974 = vld [vmem:[%s2 + $0xc98] sm:$0xff]
  %v975 = vld [vmem:[%s2 + $0xca0] sm:$0xff]
  %v976 = vld [vmem:[%s2 + $0xca8] sm:$0xff]
  %v977 = vld [vmem:[%s2 + $0xcb0] sm:$0xff]
  %v978 = vld [vmem:[%s2 + $0xcb8] sm:$0xff]
  %v979 = vld [vmem:[%s2 + $0xcc0] sm:$0xff]
  %v980 = vld [vmem:[%s2 + $0xcc8] sm:$0xff]
  %v981 = vld [vmem:[%s2 + $0xcd0] sm:$0xff]
  %v982 = vld [vmem:[%s2 + $0xcd8] sm:$0xff]
  %v983 = vld [vmem:[%s2 + $0xce0] sm:$0xff]
  %v984 = vld [vmem:[%s2 + $0xce8] sm:$0xff]
  %v985 = vld [vmem:[%s2 + $0xcf0] sm:$0xff]
  %v986 = vld [vmem:[%s2 + $0xcf8] sm:$0xff]
  %v987 = vld [vmem:[%s2 + $0xd00] sm:$0xff]
  %v988 = vld [vmem:[%s2 + $0xd08] sm:$0xff]
  %v989 = vld [vmem:[%s2 + $0xd10] sm:$0xff]
  %v990 = vld [vmem:[%s2 + $0xd18] sm:$0xff]
  %v991 = vld [vmem:[%s2 + $0xd20] sm:$0xff]
  %v992 = vld [vmem:[%s2 + $0xd28] sm:$0xff]
  %v993 = vld [vmem:[%s2 + $0xd30] sm:$0xff]
  %v994 = vld [vmem:[%s2 + $0xd38] sm:$0xff]
  %v995 = vld [vmem:[%s2 + $0xd40] sm:$0xff]
  %v996 = vld [vmem:[%s2 + $0xd48] sm:$0xff]
  %v997 = vld [vmem:[%s2 + $0xd50] sm:$0xff]
  %v998 = vld [vmem:[%s2 + $0xd58] sm:$0xff]
  %v999 = vld [vmem:[%s2 + $0xd60] sm:$0xff]
  %v1000 = vld [vmem:[%s2 + $0xd68] sm:$0xff]
  %v1001 = vld [vmem:[%s2 + $0xd70] sm:$0xff]
  %v1002 = vld [vmem:[%s2 + $0xd78] sm:$0xff]
  %v1003 = vld [vmem:[%s2 + $0xd80] sm:$0xff]
  %v1004 = vld [vmem:[%s2 + $0xd88] sm:$0xff]
  %v1005 = vld [vmem:[%s2 + $0xd90] sm:$0xff]
  %v1006 = vld [vmem:[%s2 + $0xd98] sm:$0xff]
  %v1007 = vld [vmem:[%s2 + $0xda0] sm:$0xff]
  %v1008 = vld [vmem:[%s2 + $0xda8] sm:$0xff]
  %v1009 = vld [vmem:[%s2 + $0xdb0] sm:$0xff]
  %v1010 = vld [vmem:[%s2 + $0xdb8] sm:$0xff]
  %v1011 = vld [vmem:[%s2 + $0xdc0] sm:$0xff]
  %v1012 = vld [vmem:[%s2 + $0xdc8] sm:$0xff]
  %v1013 = vld [vmem:[%s2 + $0xdd0] sm:$0xff]
  %v1014 = vld [vmem:[%s2 + $0xdd8] sm:$0xff]
  %v1015 = vld [vmem:[%s2 + $0xde0] sm:$0xff]
  %v1016 = vld [vmem:[%s2 + $0xde8] sm:$0xff]
  %v1017 = vld [vmem:[%s2 + $0xdf0] sm:$0xff]
  %v1018 = vld [vmem:[%s2 + $0xdf8] sm:$0xff]
  %v1019 = vld [vmem:[%s2 + $0xe00] sm:$0xff]
  %v1020 = vld [vmem:[%s2 + $0xe08] sm:$0xff]
  %v1021 = vld [vmem:[%s2 + $0xe10] sm:$0xff]
  %v1022 = vld [vmem:[%s2 + $0xe18] sm:$0xff]
  %v1023 = vld [vmem:[%s2 + $0xe20] sm:$0xff]
  %v1024 = vld [vmem:[%s2 + $0xe28] sm:$0xff]
  %v1025 = vld [vmem:[%s2 + $0xe30] sm:$0xff]
  %v1026 = vld [vmem:[%s2 + $0xe38] sm:$0xff]
  %v1027 = vld [vmem:[%s2 + $0xe40] sm:$0xff]
  %v1028 = vld [vmem:[%s2 + $0xe48] sm:$0xff]
  %v1029 = vld [vmem:[%s2 + $0xe50] sm:$0xff]
  %v1030 = vld [vmem:[%s2 + $0xe58] sm:$0xff]
  %v1031 = vld [vmem:[%s2 + $0xe60] sm:$0xff]
  %v1032 = vld [vmem:[%s2 + $0xe68] sm:$0xff]
  %v1033 = vld [vmem:[%s2 + $0xe70] sm:$0xff]
  %v1034 = vld [vmem:[%s2 + $0xe78] sm:$0xff]
  %v1035 = vld [vmem:[%s2 + $0xe80] sm:$0xff]
  %v1036 = vld [vmem:[%s2 + $0xe88] sm:$0xff]
  %v1037 = vld [vmem:[%s2 + $0xe90] sm:$0xff]
  %v1038 = vld [vmem:[%s2 + $0xe98] sm:$0xff]
  %v1039 = vld [vmem:[%s2 + $0xea0] sm:$0xff]
  %v1040 = vld [vmem:[%s2 + $0xea8] sm:$0xff]
  %v1041 = vld [vmem:[%s2 + $0xeb0] sm:$0xff]
  %v1042 = vld [vmem:[%s2 + $0xeb8] sm:$0xff]
  %v1043 = vld [vmem:[%s2 + $0xec0] sm:$0xff]
  %v1044 = vld [vmem:[%s2 + $0xec8] sm:$0xff]
  %v1045 = vld [vmem:[%s2 + $0xed0] sm:$0xff]
  %v1046 = vld [vmem:[%s2 + $0xed8] sm:$0xff]
  %v1047 = vld [vmem:[%s2 + $0xee0] sm:$0xff]
  %v1048 = vld [vmem:[%s2 + $0xee8] sm:$0xff]
  %v1049 = vld [vmem:[%s2 + $0xef0] sm:$0xff]
  %v1050 = vld [vmem:[%s2 + $0xef8] sm:$0xff]
  %v1051 = vld [vmem:[%s2 + $0xf00] sm:$0xff]
  %v1052 = vld [vmem:[%s2 + $0xf08] sm:$0xff]
  %v1053 = vld [vmem:[%s2 + $0xf10] sm:$0xff]
  %v1054 = vld [vmem:[%s2 + $0xf18] sm:$0xff]
  %v1055 = vld [vmem:[%s2 + $0xf20] sm:$0xff]
  %v1056 = vld [vmem:[%s2 + $0xf28] sm:$0xff]
  %v1057 = vld [vmem:[%s2 + $0xf30] sm:$0xff]
  %v1058 = vld [vmem:[%s2 + $0xf38] sm:$0xff]
  %v1059 = vld [vmem:[%s2 + $0xf40] sm:$0xff]
  %v1060 = vld [vmem:[%s2 + $0xf48] sm:$0xff]
  %v1061 = vld [vmem:[%s2 + $0xf50] sm:$0xff]
  %v1062 = vld [vmem:[%s2 + $0xf58] sm:$0xff]
  %v1063 = vld [vmem:[%s2 + $0xf60] sm:$0xff]
  %v1064 = vld [vmem:[%s2 + $0xf68] sm:$0xff]
  %v1065 = vld [vmem:[%s2 + $0xf70] sm:$0xff]
  %v1066 = vld [vmem:[%s2 + $0xf78] sm:$0xff]
  %v1067 = vld [vmem:[%s2 + $0xf80] sm:$0xff]
  %v1068 = vld [vmem:[%s2 + $0xf88] sm:$0xff]
  %v1069 = vld [vmem:[%s2 + $0xf90] sm:$0xff]
  %v1070 = vld [vmem:[%s2 + $0xf98] sm:$0xff]
  %v1071 = vld [vmem:[%s2 + $0xfa0] sm:$0xff]
  %v1072 = vld [vmem:[%s2 + $0xfa8] sm:$0xff]
  %v1073 = vld [vmem:[%s2 + $0xfb0] sm:$0xff]
  %v1074 = vld [vmem:[%s2 + $0xfb8] sm:$0xff]
  %v1075 = vld [vmem:[%s2 + $0xfc0] sm:$0xff]
  %v1076 = vld [vmem:[%s2 + $0xfc8] sm:$0xff]
  %v1077 = vld [vmem:[%s2 + $0xfd0] sm:$0xff]
  %v1078 = vld [vmem:[%s2 + $0xfd8] sm:$0xff]
  %v1079 = vld [vmem:[%s2 + $0xfe0] sm:$0xff]
  %v1080 = vld [vmem:[%s2 + $0xfe8] sm:$0xff]
  %v1081 = vld [vmem:[%s2 + $0xff0] sm:$0xff]
  %v1082 = vld [vmem:[%s2 + $0xff8] sm:$0xff]
  %1083 = vmatpush.msra.mxu0 %v691
  %1084 = vmatpush.msra.mxu0 %v683
  %1085 = vmatpush.msra.mxu0 %v675
  %1086 = vmatpush.msra.mxu0 %v667
  %1087 = vmatpush.msra.mxu0 %v659
  %1088 = vmatpush.msra.mxu0 %v651
  %1089 = vmatpush.msra.mxu0 %v643
  %1090 = vmatpush.msra.mxu0 %v635
  %1091 = vmatpush.msra.mxu0 %v627
  %1092 = vmatpush.msra.mxu0 %v619
  %1093 = vmatpush.msra.mxu0 %v611
  %1094 = vmatpush.msra.mxu0 %v603
  %1095 = vmatpush.msra.mxu0 %v595
  %1096 = vmatpush.msra.mxu0 %v587
  %1097 = vmatpush.msra.mxu0 %v579
  %1098 = vmatpush.msra.mxu0 %v571
  %1099 = vmatmul.f32.gmra.mxu0 %v561
  %v1100 = vpop.f32.mrf.mxu0
  %v1101 = vadd.f32 0.0, %v1100
  %1102 = vdwg.mxu0
  %1103 = vmatpush.msra.mxu0 %v819
  %1104 = vmatpush.msra.mxu0 %v811
  %1105 = vmatpush.msra.mxu0 %v803
  %1106 = vmatpush.msra.mxu0 %v795
  %1107 = vmatpush.msra.mxu0 %v787
  %1108 = vmatpush.msra.mxu0 %v779
  %1109 = vmatpush.msra.mxu0 %v771
  %1110 = vmatpush.msra.mxu0 %v763
  %1111 = vmatpush.msra.mxu0 %v755
  %1112 = vmatpush.msra.mxu0 %v747
  %1113 = vmatpush.msra.mxu0 %v739
  %1114 = vmatpush.msra.mxu0 %v731
  %1115 = vmatpush.msra.mxu0 %v723
  %1116 = vmatpush.msra.mxu0 %v715
  %1117 = vmatpush.msra.mxu0 %v707
  %1118 = vmatpush.msra.mxu0 %v699
  %1119 = vmatmul.f32.gmra.mxu0 %v561
  %v1120 = vpop.f32.mrf.mxu0
  %v1121 = vadd.f32 %v1101, %v1120
  %1122 = vdwg.mxu0
  %1123 = vmatpush.msra.mxu0 %v947
  %1124 = vmatpush.msra.mxu0 %v939
  %1125 = vmatpush.msra.mxu0 %v931
  %1126 = vmatpush.msra.mxu0 %v923
  %1127 = vmatpush.msra.mxu0 %v915
  %1128 = vmatpush.msra.mxu0 %v907
  %1129 = vmatpush.msra.mxu0 %v899
  %1130 = vmatpush.msra.mxu0 %v891
  %1131 = vmatpush.msra.mxu0 %v883
  %1132 = vmatpush.msra.mxu0 %v875
  %1133 = vmatpush.msra.mxu0 %v867
  %1134 = vmatpush.msra.mxu0 %v859
  %1135 = vmatpush.msra.mxu0 %v851
  %1136 = vmatpush.msra.mxu0 %v843
  %1137 = vmatpush.msra.mxu0 %v835
  %1138 = vmatpush.msra.mxu0 %v827
  %1139 = vmatmul.f32.gmra.mxu0 %v562
  %v1140 = vpop.f32.mrf.mxu0
  %v1141 = vadd.f32 %v1121, %v1140
  %1142 = vdwg.mxu0
  %1143 = vmatpush.msra.mxu0 %v1075
  %1144 = vmatpush.msra.mxu0 %v1067
  %1145 = vmatpush.msra.mxu0 %v1059
  %1146 = vmatpush.msra.mxu0 %v1051
  %1147 = vmatpush.msra.mxu0 %v1043
  %1148 = vmatpush.msra.mxu0 %v1035
  %1149 = vmatpush.msra.mxu0 %v1027
  %1150 = vmatpush.msra.mxu0 %v1019
  %1151 = vmatpush.msra.mxu0 %v1011
  %1152 = vmatpush.msra.mxu0 %v1003
  %1153 = vmatpush.msra.mxu0 %v995
  %1154 = vmatpush.msra.mxu0 %v987
  %1155 = vmatpush.msra.mxu0 %v979
  %1156 = vmatpush.msra.mxu0 %v971
  %1157 = vmatpush.msra.mxu0 %v963
  %1158 = vmatpush.msra.mxu0 %v955
  %1159 = vmatmul.f32.gmra.mxu0 %v562
  %v1160 = vpop.f32.mrf.mxu0
  %v1161 = vadd.f32 %v1141, %v1160
  %1162 = vdwg.mxu0
  %1163 = vmatpush.msra.mxu0 %v692
  %1164 = vmatpush.msra.mxu0 %v684
  %1165 = vmatpush.msra.mxu0 %v676
  %1166 = vmatpush.msra.mxu0 %v668
  %1167 = vmatpush.msra.mxu0 %v660
  %1168 = vmatpush.msra.mxu0 %v652
  %1169 = vmatpush.msra.mxu0 %v644
  %1170 = vmatpush.msra.mxu0 %v636
  %1171 = vmatpush.msra.mxu0 %v628
  %1172 = vmatpush.msra.mxu0 %v620
  %1173 = vmatpush.msra.mxu0 %v612
  %1174 = vmatpush.msra.mxu0 %v604
  %1175 = vmatpush.msra.mxu0 %v596
  %1176 = vmatpush.msra.mxu0 %v588
  %1177 = vmatpush.msra.mxu0 %v580
  %1178 = vmatpush.msra.mxu0 %v572
  %1179 = vmatmul.f32.gmra.mxu0 %v561
  %v1180 = vpop.f32.mrf.mxu0
  %v1181 = vadd.f32 0.0, %v1180
  %1182 = vdwg.mxu0
  %1183 = vmatpush.msra.mxu0 %v820
  %1184 = vmatpush.msra.mxu0 %v812
  %1185 = vmatpush.msra.mxu0 %v804
  %1186 = vmatpush.msra.mxu0 %v796
  %1187 = vmatpush.msra.mxu0 %v788
  %1188 = vmatpush.msra.mxu0 %v780
  %1189 = vmatpush.msra.mxu0 %v772
  %1190 = vmatpush.msra.mxu0 %v764
  %1191 = vmatpush.msra.mxu0 %v756
  %1192 = vmatpush.msra.mxu0 %v748
  %1193 = vmatpush.msra.mxu0 %v740
  %1194 = vmatpush.msra.mxu0 %v732
  %1195 = vmatpush.msra.mxu0 %v724
  %1196 = vmatpush.msra.mxu0 %v716
  %1197 = vmatpush.msra.mxu0 %v708
  %1198 = vmatpush.msra.mxu0 %v700
  %1199 = vmatmul.f32.gmra.mxu0 %v561
  %v1200 = vpop.f32.mrf.mxu0
  %v1201 = vadd.f32 %v1181, %v1200
  %1202 = vdwg.mxu0
  %1203 = vmatpush.msra.mxu0 %v948
  %1204 = vmatpush.msra.mxu0 %v940
  %1205 = vmatpush.msra.mxu0 %v932
  %1206 = vmatpush.msra.mxu0 %v924
  %1207 = vmatpush.msra.mxu0 %v916
  %1208 = vmatpush.msra.mxu0 %v908
  %1209 = vmatpush.msra.mxu0 %v900
  %1210 = vmatpush.msra.mxu0 %v892
  %1211 = vmatpush.msra.mxu0 %v884
  %1212 = vmatpush.msra.mxu0 %v876
  %1213 = vmatpush.msra.mxu0 %v868
  %1214 = vmatpush.msra.mxu0 %v860
  %1215 = vmatpush.msra.mxu0 %v852
  %1216 = vmatpush.msra.mxu0 %v844
  %1217 = vmatpush.msra.mxu0 %v836
  %1218 = vmatpush.msra.mxu0 %v828
  %1219 = vmatmul.f32.gmra.mxu0 %v562
  %v1220 = vpop.f32.mrf.mxu0
  %v1221 = vadd.f32 %v1201, %v1220
  %1222 = vdwg.mxu0
  %1223 = vmatpush.msra.mxu0 %v1076
  %1224 = vmatpush.msra.mxu0 %v1068
  %1225 = vmatpush.msra.mxu0 %v1060
  %1226 = vmatpush.msra.mxu0 %v1052
  %1227 = vmatpush.msra.mxu0 %v1044
  %1228 = vmatpush.msra.mxu0 %v1036
  %1229 = vmatpush.msra.mxu0 %v1028
  %1230 = vmatpush.msra.mxu0 %v1020
  %1231 = vmatpush.msra.mxu0 %v1012
  %1232 = vmatpush.msra.mxu0 %v1004
  %1233 = vmatpush.msra.mxu0 %v996
  %1234 = vmatpush.msra.mxu0 %v988
  %1235 = vmatpush.msra.mxu0 %v980
  %1236 = vmatpush.msra.mxu0 %v972
  %1237 = vmatpush.msra.mxu0 %v964
  %1238 = vmatpush.msra.mxu0 %v956
  %1239 = vmatmul.f32.gmra.mxu0 %v562
  %v1240 = vpop.f32.mrf.mxu0
  %v1241 = vadd.f32 %v1221, %v1240
  %1242 = vdwg.mxu0
  %1243 = vmatpush.msra.mxu0 %v693
  %1244 = vmatpush.msra.mxu0 %v685
  %1245 = vmatpush.msra.mxu0 %v677
  %1246 = vmatpush.msra.mxu0 %v669
  %1247 = vmatpush.msra.mxu0 %v661
  %1248 = vmatpush.msra.mxu0 %v653
  %1249 = vmatpush.msra.mxu0 %v645
  %1250 = vmatpush.msra.mxu0 %v637
  %1251 = vmatpush.msra.mxu0 %v629
  %1252 = vmatpush.msra.mxu0 %v621
  %1253 = vmatpush.msra.mxu0 %v613
  %1254 = vmatpush.msra.mxu0 %v605
  %1255 = vmatpush.msra.mxu0 %v597
  %1256 = vmatpush.msra.mxu0 %v589
  %1257 = vmatpush.msra.mxu0 %v581
  %1258 = vmatpush.msra.mxu0 %v573
  %1259 = vmatmul.f32.gmra.mxu0 %v561
  %v1260 = vpop.f32.mrf.mxu0
  %v1261 = vadd.f32 0.0, %v1260
  %1262 = vdwg.mxu0
  %1263 = vmatpush.msra.mxu0 %v821
  %1264 = vmatpush.msra.mxu0 %v813
  %1265 = vmatpush.msra.mxu0 %v805
  %1266 = vmatpush.msra.mxu0 %v797
  %1267 = vmatpush.msra.mxu0 %v789
  %1268 = vmatpush.msra.mxu0 %v781
  %1269 = vmatpush.msra.mxu0 %v773
  %1270 = vmatpush.msra.mxu0 %v765
  %1271 = vmatpush.msra.mxu0 %v757
  %1272 = vmatpush.msra.mxu0 %v749
  %1273 = vmatpush.msra.mxu0 %v741
  %1274 = vmatpush.msra.mxu0 %v733
  %1275 = vmatpush.msra.mxu0 %v725
  %1276 = vmatpush.msra.mxu0 %v717
  %1277 = vmatpush.msra.mxu0 %v709
  %1278 = vmatpush.msra.mxu0 %v701
  %1279 = vmatmul.f32.gmra.mxu0 %v561
  %v1280 = vpop.f32.mrf.mxu0
  %v1281 = vadd.f32 %v1261, %v1280
  %1282 = vdwg.mxu0
  %1283 = vmatpush.msra.mxu0 %v949
  %1284 = vmatpush.msra.mxu0 %v941
  %1285 = vmatpush.msra.mxu0 %v933
  %1286 = vmatpush.msra.mxu0 %v925
  %1287 = vmatpush.msra.mxu0 %v917
  %1288 = vmatpush.msra.mxu0 %v909
  %1289 = vmatpush.msra.mxu0 %v901
  %1290 = vmatpush.msra.mxu0 %v893
  %1291 = vmatpush.msra.mxu0 %v885
  %1292 = vmatpush.msra.mxu0 %v877
  %1293 = vmatpush.msra.mxu0 %v869
  %1294 = vmatpush.msra.mxu0 %v861
  %1295 = vmatpush.msra.mxu0 %v853
  %1296 = vmatpush.msra.mxu0 %v845
  %1297 = vmatpush.msra.mxu0 %v837
  %1298 = vmatpush.msra.mxu0 %v829
  %1299 = vmatmul.f32.gmra.mxu0 %v562
  %v1300 = vpop.f32.mrf.mxu0
  %v1301 = vadd.f32 %v1281, %v1300
  %1302 = vdwg.mxu0
  %1303 = vmatpush.msra.mxu0 %v1077
  %1304 = vmatpush.msra.mxu0 %v1069
  %1305 = vmatpush.msra.mxu0 %v1061
  %1306 = vmatpush.msra.mxu0 %v1053
  %1307 = vmatpush.msra.mxu0 %v1045
  %1308 = vmatpush.msra.mxu0 %v1037
  %1309 = vmatpush.msra.mxu0 %v1029
  %1310 = vmatpush.msra.mxu0 %v1021
  %1311 = vmatpush.msra.mxu0 %v1013
  %1312 = vmatpush.msra.mxu0 %v1005
  %1313 = vmatpush.msra.mxu0 %v997
  %1314 = vmatpush.msra.mxu0 %v989
  %1315 = vmatpush.msra.mxu0 %v981
  %1316 = vmatpush.msra.mxu0 %v973
  %1317 = vmatpush.msra.mxu0 %v965
  %1318 = vmatpush.msra.mxu0 %v957
  %1319 = vmatmul.f32.gmra.mxu0 %v562
  %v1320 = vpop.f32.mrf.mxu0
  %v1321 = vadd.f32 %v1301, %v1320
  %1322 = vdwg.mxu0
  %1323 = vmatpush.msra.mxu0 %v694
  %1324 = vmatpush.msra.mxu0 %v686
  %1325 = vmatpush.msra.mxu0 %v678
  %1326 = vmatpush.msra.mxu0 %v670
  %1327 = vmatpush.msra.mxu0 %v662
  %1328 = vmatpush.msra.mxu0 %v654
  %1329 = vmatpush.msra.mxu0 %v646
  %1330 = vmatpush.msra.mxu0 %v638
  %1331 = vmatpush.msra.mxu0 %v630
  %1332 = vmatpush.msra.mxu0 %v622
  %1333 = vmatpush.msra.mxu0 %v614
  %1334 = vmatpush.msra.mxu0 %v606
  %1335 = vmatpush.msra.mxu0 %v598
  %1336 = vmatpush.msra.mxu0 %v590
  %1337 = vmatpush.msra.mxu0 %v582
  %1338 = vmatpush.msra.mxu0 %v574
  %1339 = vmatmul.f32.gmra.mxu0 %v561
  %v1340 = vpop.f32.mrf.mxu0
  %v1341 = vadd.f32 0.0, %v1340
  %1342 = vdwg.mxu0
  %1343 = vmatpush.msra.mxu0 %v822
  %1344 = vmatpush.msra.mxu0 %v814
  %1345 = vmatpush.msra.mxu0 %v806
  %1346 = vmatpush.msra.mxu0 %v798
  %1347 = vmatpush.msra.mxu0 %v790
  %1348 = vmatpush.msra.mxu0 %v782
  %1349 = vmatpush.msra.mxu0 %v774
  %1350 = vmatpush.msra.mxu0 %v766
  %1351 = vmatpush.msra.mxu0 %v758
  %1352 = vmatpush.msra.mxu0 %v750
  %1353 = vmatpush.msra.mxu0 %v742
  %1354 = vmatpush.msra.mxu0 %v734
  %1355 = vmatpush.msra.mxu0 %v726
  %1356 = vmatpush.msra.mxu0 %v718
  %1357 = vmatpush.msra.mxu0 %v710
  %1358 = vmatpush.msra.mxu0 %v702
  %1359 = vmatmul.f32.gmra.mxu0 %v561
  %v1360 = vpop.f32.mrf.mxu0
  %v1361 = vadd.f32 %v1341, %v1360
  %1362 = vdwg.mxu0
  %1363 = vmatpush.msra.mxu0 %v950
  %1364 = vmatpush.msra.mxu0 %v942
  %1365 = vmatpush.msra.mxu0 %v934
  %1366 = vmatpush.msra.mxu0 %v926
  %1367 = vmatpush.msra.mxu0 %v918
  %1368 = vmatpush.msra.mxu0 %v910
  %1369 = vmatpush.msra.mxu0 %v902
  %1370 = vmatpush.msra.mxu0 %v894
  %1371 = vmatpush.msra.mxu0 %v886
  %1372 = vmatpush.msra.mxu0 %v878
  %1373 = vmatpush.msra.mxu0 %v870
  %1374 = vmatpush.msra.mxu0 %v862
  %1375 = vmatpush.msra.mxu0 %v854
  %1376 = vmatpush.msra.mxu0 %v846
  %1377 = vmatpush.msra.mxu0 %v838
  %1378 = vmatpush.msra.mxu0 %v830
  %1379 = vmatmul.f32.gmra.mxu0 %v562
  %v1380 = vpop.f32.mrf.mxu0
  %v1381 = vadd.f32 %v1361, %v1380
  %1382 = vdwg.mxu0
  %1383 = vmatpush.msra.mxu0 %v1078
  %1384 = vmatpush.msra.mxu0 %v1070
  %1385 = vmatpush.msra.mxu0 %v1062
  %1386 = vmatpush.msra.mxu0 %v1054
  %1387 = vmatpush.msra.mxu0 %v1046
  %1388 = vmatpush.msra.mxu0 %v1038
  %1389 = vmatpush.msra.mxu0 %v1030
  %1390 = vmatpush.msra.mxu0 %v1022
  %1391 = vmatpush.msra.mxu0 %v1014
  %1392 = vmatpush.msra.mxu0 %v1006
  %1393 = vmatpush.msra.mxu0 %v998
  %1394 = vmatpush.msra.mxu0 %v990
  %1395 = vmatpush.msra.mxu0 %v982
  %1396 = vmatpush.msra.mxu0 %v974
  %1397 = vmatpush.msra.mxu0 %v966
  %1398 = vmatpush.msra.mxu0 %v958
  %1399 = vmatmul.f32.gmra.mxu0 %v562
  %v1400 = vpop.f32.mrf.mxu0
  %v1401 = vadd.f32 %v1381, %v1400
  %1402 = vdwg.mxu0
  %1403 = vmatpush.msra.mxu0 %v695
  %1404 = vmatpush.msra.mxu0 %v687
  %1405 = vmatpush.msra.mxu0 %v679
  %1406 = vmatpush.msra.mxu0 %v671
  %1407 = vmatpush.msra.mxu0 %v663
  %1408 = vmatpush.msra.mxu0 %v655
  %1409 = vmatpush.msra.mxu0 %v647
  %1410 = vmatpush.msra.mxu0 %v639
  %1411 = vmatpush.msra.mxu0 %v631
  %1412 = vmatpush.msra.mxu0 %v623
  %1413 = vmatpush.msra.mxu0 %v615
  %1414 = vmatpush.msra.mxu0 %v607
  %1415 = vmatpush.msra.mxu0 %v599
  %1416 = vmatpush.msra.mxu0 %v591
  %1417 = vmatpush.msra.mxu0 %v583
  %1418 = vmatpush.msra.mxu0 %v575
  %1419 = vmatmul.f32.gmra.mxu0 %v561
  %v1420 = vpop.f32.mrf.mxu0
  %v1421 = vadd.f32 0.0, %v1420
  %1422 = vdwg.mxu0
  %1423 = vmatpush.msra.mxu0 %v823
  %1424 = vmatpush.msra.mxu0 %v815
  %1425 = vmatpush.msra.mxu0 %v807
  %1426 = vmatpush.msra.mxu0 %v799
  %1427 = vmatpush.msra.mxu0 %v791
  %1428 = vmatpush.msra.mxu0 %v783
  %1429 = vmatpush.msra.mxu0 %v775
  %1430 = vmatpush.msra.mxu0 %v767
  %1431 = vmatpush.msra.mxu0 %v759
  %1432 = vmatpush.msra.mxu0 %v751
  %1433 = vmatpush.msra.mxu0 %v743
  %1434 = vmatpush.msra.mxu0 %v735
  %1435 = vmatpush.msra.mxu0 %v727
  %1436 = vmatpush.msra.mxu0 %v719
  %1437 = vmatpush.msra.mxu0 %v711
  %1438 = vmatpush.msra.mxu0 %v703
  %1439 = vmatmul.f32.gmra.mxu0 %v561
  %v1440 = vpop.f32.mrf.mxu0
  %v1441 = vadd.f32 %v1421, %v1440
  %1442 = vdwg.mxu0
  %1443 = vmatpush.msra.mxu0 %v951
  %1444 = vmatpush.msra.mxu0 %v943
  %1445 = vmatpush.msra.mxu0 %v935
  %1446 = vmatpush.msra.mxu0 %v927
  %1447 = vmatpush.msra.mxu0 %v919
  %1448 = vmatpush.msra.mxu0 %v911
  %1449 = vmatpush.msra.mxu0 %v903
  %1450 = vmatpush.msra.mxu0 %v895
  %1451 = vmatpush.msra.mxu0 %v887
  %1452 = vmatpush.msra.mxu0 %v879
  %1453 = vmatpush.msra.mxu0 %v871
  %1454 = vmatpush.msra.mxu0 %v863
  %1455 = vmatpush.msra.mxu0 %v855
  %1456 = vmatpush.msra.mxu0 %v847
  %1457 = vmatpush.msra.mxu0 %v839
  %1458 = vmatpush.msra.mxu0 %v831
  %1459 = vmatmul.f32.gmra.mxu0 %v562
  %v1460 = vpop.f32.mrf.mxu0
  %v1461 = vadd.f32 %v1441, %v1460
  %1462 = vdwg.mxu0
  %1463 = vmatpush.msra.mxu0 %v1079
  %1464 = vmatpush.msra.mxu0 %v1071
  %1465 = vmatpush.msra.mxu0 %v1063
  %1466 = vmatpush.msra.mxu0 %v1055
  %1467 = vmatpush.msra.mxu0 %v1047
  %1468 = vmatpush.msra.mxu0 %v1039
  %1469 = vmatpush.msra.mxu0 %v1031
  %1470 = vmatpush.msra.mxu0 %v1023
  %1471 = vmatpush.msra.mxu0 %v1015
  %1472 = vmatpush.msra.mxu0 %v1007
  %1473 = vmatpush.msra.mxu0 %v999
  %1474 = vmatpush.msra.mxu0 %v991
  %1475 = vmatpush.msra.mxu0 %v983
  %1476 = vmatpush.msra.mxu0 %v975
  %1477 = vmatpush.msra.mxu0 %v967
  %1478 = vmatpush.msra.mxu0 %v959
  %1479 = vmatmul.f32.gmra.mxu0 %v562
  %v1480 = vpop.f32.mrf.mxu0
  %v1481 = vadd.f32 %v1461, %v1480
  %1482 = vdwg.mxu0
  %1483 = vmatpush.msra.mxu0 %v696
  %1484 = vmatpush.msra.mxu0 %v688
  %1485 = vmatpush.msra.mxu0 %v680
  %1486 = vmatpush.msra.mxu0 %v672
  %1487 = vmatpush.msra.mxu0 %v664
  %1488 = vmatpush.msra.mxu0 %v656
  %1489 = vmatpush.msra.mxu0 %v648
  %1490 = vmatpush.msra.mxu0 %v640
  %1491 = vmatpush.msra.mxu0 %v632
  %1492 = vmatpush.msra.mxu0 %v624
  %1493 = vmatpush.msra.mxu0 %v616
  %1494 = vmatpush.msra.mxu0 %v608
  %1495 = vmatpush.msra.mxu0 %v600
  %1496 = vmatpush.msra.mxu0 %v592
  %1497 = vmatpush.msra.mxu0 %v584
  %1498 = vmatpush.msra.mxu0 %v576
  %1499 = vmatmul.f32.gmra.mxu0 %v561
  %v1500 = vpop.f32.mrf.mxu0
  %v1501 = vadd.f32 0.0, %v1500
  %1502 = vdwg.mxu0
  %1503 = vmatpush.msra.mxu0 %v824
  %1504 = vmatpush.msra.mxu0 %v816
  %1505 = vmatpush.msra.mxu0 %v808
  %1506 = vmatpush.msra.mxu0 %v800
  %1507 = vmatpush.msra.mxu0 %v792
  %1508 = vmatpush.msra.mxu0 %v784
  %1509 = vmatpush.msra.mxu0 %v776
  %1510 = vmatpush.msra.mxu0 %v768
  %1511 = vmatpush.msra.mxu0 %v760
  %1512 = vmatpush.msra.mxu0 %v752
  %1513 = vmatpush.msra.mxu0 %v744
  %1514 = vmatpush.msra.mxu0 %v736
  %1515 = vmatpush.msra.mxu0 %v728
  %1516 = vmatpush.msra.mxu0 %v720
  %1517 = vmatpush.msra.mxu0 %v712
  %1518 = vmatpush.msra.mxu0 %v704
  %1519 = vmatmul.f32.gmra.mxu0 %v561
  %v1520 = vpop.f32.mrf.mxu0
  %v1521 = vadd.f32 %v1501, %v1520
  %1522 = vdwg.mxu0
  %1523 = vmatpush.msra.mxu0 %v952
  %1524 = vmatpush.msra.mxu0 %v944
  %1525 = vmatpush.msra.mxu0 %v936
  %1526 = vmatpush.msra.mxu0 %v928
  %1527 = vmatpush.msra.mxu0 %v920
  %1528 = vmatpush.msra.mxu0 %v912
  %1529 = vmatpush.msra.mxu0 %v904
  %1530 = vmatpush.msra.mxu0 %v896
  %1531 = vmatpush.msra.mxu0 %v888
  %1532 = vmatpush.msra.mxu0 %v880
  %1533 = vmatpush.msra.mxu0 %v872
  %1534 = vmatpush.msra.mxu0 %v864
  %1535 = vmatpush.msra.mxu0 %v856
  %1536 = vmatpush.msra.mxu0 %v848
  %1537 = vmatpush.msra.mxu0 %v840
  %1538 = vmatpush.msra.mxu0 %v832
  %1539 = vmatmul.f32.gmra.mxu0 %v562
  %v1540 = vpop.f32.mrf.mxu0
  %v1541 = vadd.f32 %v1521, %v1540
  %1542 = vdwg.mxu0
  %1543 = vmatpush.msra.mxu0 %v1080
  %1544 = vmatpush.msra.mxu0 %v1072
  %1545 = vmatpush.msra.mxu0 %v1064
  %1546 = vmatpush.msra.mxu0 %v1056
  %1547 = vmatpush.msra.mxu0 %v1048
  %1548 = vmatpush.msra.mxu0 %v1040
  %1549 = vmatpush.msra.mxu0 %v1032
  %1550 = vmatpush.msra.mxu0 %v1024
  %1551 = vmatpush.msra.mxu0 %v1016
  %1552 = vmatpush.msra.mxu0 %v1008
  %1553 = vmatpush.msra.mxu0 %v1000
  %1554 = vmatpush.msra.mxu0 %v992
  %1555 = vmatpush.msra.mxu0 %v984
  %1556 = vmatpush.msra.mxu0 %v976
  %1557 = vmatpush.msra.mxu0 %v968
  %1558 = vmatpush.msra.mxu0 %v960
  %1559 = vmatmul.f32.gmra.mxu0 %v562
  %v1560 = vpop.f32.mrf.mxu0
  %v1561 = vadd.f32 %v1541, %v1560
  %1562 = vdwg.mxu0
  %1563 = vmatpush.msra.mxu0 %v697
  %1564 = vmatpush.msra.mxu0 %v689
  %1565 = vmatpush.msra.mxu0 %v681
  %1566 = vmatpush.msra.mxu0 %v673
  %1567 = vmatpush.msra.mxu0 %v665
  %1568 = vmatpush.msra.mxu0 %v657
  %1569 = vmatpush.msra.mxu0 %v649
  %1570 = vmatpush.msra.mxu0 %v641
  %1571 = vmatpush.msra.mxu0 %v633
  %1572 = vmatpush.msra.mxu0 %v625
  %1573 = vmatpush.msra.mxu0 %v617
  %1574 = vmatpush.msra.mxu0 %v609
  %1575 = vmatpush.msra.mxu0 %v601
  %1576 = vmatpush.msra.mxu0 %v593
  %1577 = vmatpush.msra.mxu0 %v585
  %1578 = vmatpush.msra.mxu0 %v577
  %1579 = vmatmul.f32.gmra.mxu0 %v561
  %v1580 = vpop.f32.mrf.mxu0
  %v1581 = vadd.f32 0.0, %v1580
  %1582 = vdwg.mxu0
  %1583 = vmatpush.msra.mxu0 %v825
  %1584 = vmatpush.msra.mxu0 %v817
  %1585 = vmatpush.msra.mxu0 %v809
  %1586 = vmatpush.msra.mxu0 %v801
  %1587 = vmatpush.msra.mxu0 %v793
  %1588 = vmatpush.msra.mxu0 %v785
  %1589 = vmatpush.msra.mxu0 %v777
  %1590 = vmatpush.msra.mxu0 %v769
  %1591 = vmatpush.msra.mxu0 %v761
  %1592 = vmatpush.msra.mxu0 %v753
  %1593 = vmatpush.msra.mxu0 %v745
  %1594 = vmatpush.msra.mxu0 %v737
  %1595 = vmatpush.msra.mxu0 %v729
  %1596 = vmatpush.msra.mxu0 %v721
  %1597 = vmatpush.msra.mxu0 %v713
  %1598 = vmatpush.msra.mxu0 %v705
  %1599 = vmatmul.f32.gmra.mxu0 %v561
  %v1600 = vpop.f32.mrf.mxu0
  %v1601 = vadd.f32 %v1581, %v1600
  %1602 = vdwg.mxu0
  %1603 = vmatpush.msra.mxu0 %v953
  %1604 = vmatpush.msra.mxu0 %v945
  %1605 = vmatpush.msra.mxu0 %v937
  %1606 = vmatpush.msra.mxu0 %v929
  %1607 = vmatpush.msra.mxu0 %v921
  %1608 = vmatpush.msra.mxu0 %v913
  %1609 = vmatpush.msra.mxu0 %v905
  %1610 = vmatpush.msra.mxu0 %v897
  %1611 = vmatpush.msra.mxu0 %v889
  %1612 = vmatpush.msra.mxu0 %v881
  %1613 = vmatpush.msra.mxu0 %v873
  %1614 = vmatpush.msra.mxu0 %v865
  %1615 = vmatpush.msra.mxu0 %v857
  %1616 = vmatpush.msra.mxu0 %v849
  %1617 = vmatpush.msra.mxu0 %v841
  %1618 = vmatpush.msra.mxu0 %v833
  %1619 = vmatmul.f32.gmra.mxu0 %v562
  %v1620 = vpop.f32.mrf.mxu0
  %v1621 = vadd.f32 %v1601, %v1620
  %1622 = vdwg.mxu0
  %1623 = vmatpush.msra.mxu0 %v1081
  %1624 = vmatpush.msra.mxu0 %v1073
  %1625 = vmatpush.msra.mxu0 %v1065
  %1626 = vmatpush.msra.mxu0 %v1057
  %1627 = vmatpush.msra.mxu0 %v1049
  %1628 = vmatpush.msra.mxu0 %v1041
  %1629 = vmatpush.msra.mxu0 %v1033
  %1630 = vmatpush.msra.mxu0 %v1025
  %1631 = vmatpush.msra.mxu0 %v1017
  %1632 = vmatpush.msra.mxu0 %v1009
  %1633 = vmatpush.msra.mxu0 %v1001
  %1634 = vmatpush.msra.mxu0 %v993
  %1635 = vmatpush.msra.mxu0 %v985
  %1636 = vmatpush.msra.mxu0 %v977
  %1637 = vmatpush.msra.mxu0 %v969
  %1638 = vmatpush.msra.mxu0 %v961
  %1639 = vmatmul.f32.gmra.mxu0 %v562
  %v1640 = vpop.f32.mrf.mxu0
  %v1641 = vadd.f32 %v1621, %v1640
  %1642 = vdwg.mxu0
  %1643 = vmatpush.msra.mxu0 %v698
  %1644 = vmatpush.msra.mxu0 %v690
  %1645 = vmatpush.msra.mxu0 %v682
  %1646 = vmatpush.msra.mxu0 %v674
  %1647 = vmatpush.msra.mxu0 %v666
  %1648 = vmatpush.msra.mxu0 %v658
  %1649 = vmatpush.msra.mxu0 %v650
  %1650 = vmatpush.msra.mxu0 %v642
  %1651 = vmatpush.msra.mxu0 %v634
  %1652 = vmatpush.msra.mxu0 %v626
  %1653 = vmatpush.msra.mxu0 %v618
  %1654 = vmatpush.msra.mxu0 %v610
  %1655 = vmatpush.msra.mxu0 %v602
  %1656 = vmatpush.msra.mxu0 %v594
  %1657 = vmatpush.msra.mxu0 %v586
  %1658 = vmatpush.msra.mxu0 %v578
  %1659 = vmatmul.f32.gmra.mxu0 %v561
  %v1660 = vpop.f32.mrf.mxu0
  %v1661 = vadd.f32 0.0, %v1660
  %1662 = vdwg.mxu0
  %1663 = vmatpush.msra.mxu0 %v826
  %1664 = vmatpush.msra.mxu0 %v818
  %1665 = vmatpush.msra.mxu0 %v810
  %1666 = vmatpush.msra.mxu0 %v802
  %1667 = vmatpush.msra.mxu0 %v794
  %1668 = vmatpush.msra.mxu0 %v786
  %1669 = vmatpush.msra.mxu0 %v778
  %1670 = vmatpush.msra.mxu0 %v770
  %1671 = vmatpush.msra.mxu0 %v762
  %1672 = vmatpush.msra.mxu0 %v754
  %1673 = vmatpush.msra.mxu0 %v746
  %1674 = vmatpush.msra.mxu0 %v738
  %1675 = vmatpush.msra.mxu0 %v730
  %1676 = vmatpush.msra.mxu0 %v722
  %1677 = vmatpush.msra.mxu0 %v714
  %1678 = vmatpush.msra.mxu0 %v706
  %1679 = vmatmul.f32.gmra.mxu0 %v561
  %v1680 = vpop.f32.mrf.mxu0
  %v1681 = vadd.f32 %v1661, %v1680
  %1682 = vdwg.mxu0
  %1683 = vmatpush.msra.mxu0 %v954
  %1684 = vmatpush.msra.mxu0 %v946
  %1685 = vmatpush.msra.mxu0 %v938
  %1686 = vmatpush.msra.mxu0 %v930
  %1687 = vmatpush.msra.mxu0 %v922
  %1688 = vmatpush.msra.mxu0 %v914
  %1689 = vmatpush.msra.mxu0 %v906
  %1690 = vmatpush.msra.mxu0 %v898
  %1691 = vmatpush.msra.mxu0 %v890
  %1692 = vmatpush.msra.mxu0 %v882
  %1693 = vmatpush.msra.mxu0 %v874
  %1694 = vmatpush.msra.mxu0 %v866
  %1695 = vmatpush.msra.mxu0 %v858
  %1696 = vmatpush.msra.mxu0 %v850
  %1697 = vmatpush.msra.mxu0 %v842
  %1698 = vmatpush.msra.mxu0 %v834
  %1699 = vmatmul.f32.gmra.mxu0 %v562
  %v1700 = vpop.f32.mrf.mxu0
  %v1701 = vadd.f32 %v1681, %v1700
  %1702 = vdwg.mxu0
  %1703 = vmatpush.msra.mxu0 %v1082
  %1704 = vmatpush.msra.mxu0 %v1074
  %1705 = vmatpush.msra.mxu0 %v1066
  %1706 = vmatpush.msra.mxu0 %v1058
  %1707 = vmatpush.msra.mxu0 %v1050
  %1708 = vmatpush.msra.mxu0 %v1042
  %1709 = vmatpush.msra.mxu0 %v1034
  %1710 = vmatpush.msra.mxu0 %v1026
  %1711 = vmatpush.msra.mxu0 %v1018
  %1712 = vmatpush.msra.mxu0 %v1010
  %1713 = vmatpush.msra.mxu0 %v1002
  %1714 = vmatpush.msra.mxu0 %v994
  %1715 = vmatpush.msra.mxu0 %v986
  %1716 = vmatpush.msra.mxu0 %v978
  %1717 = vmatpush.msra.mxu0 %v970
  %1718 = vmatpush.msra.mxu0 %v962
  %1719 = vmatmul.f32.gmra.mxu0 %v562
  %v1720 = vpop.f32.mrf.mxu0
  %v1721 = vadd.f32 %v1701, %v1720
  %1722 = vdwg.mxu0
  %v1723 = vadd.f32 %v563, %v1161
  %v1724 = vadd.f32 %v564, %v1241
  %v1725 = vadd.f32 %v565, %v1321
  %v1726 = vadd.f32 %v566, %v1401
  %v1727 = vadd.f32 %v567, %v1481
  %v1728 = vadd.f32 %v568, %v1561
  %v1729 = vadd.f32 %v569, %v1641
  %v1730 = vadd.f32 %v570, %v1721
  %v1731 = vxor.u32 %v1723, 2147483648
  %v1732 = vxor.u32 %v1724, 2147483648
  %v1733 = vxor.u32 %v1725, 2147483648
  %v1734 = vxor.u32 %v1726, 2147483648
  %v1735 = vxor.u32 %v1727, 2147483648
  %v1736 = vxor.u32 %v1728, 2147483648
  %v1737 = vmul.f32 %v1731, 1.442695
  %v1738 = vpow.pop %v1737
  %v1739 = vmul.f32 %v1732, 1.442695
  %v1740 = vpow.pop %v1739
  %v1741 = vmul.f32 %v1733, 1.442695
  %v1742 = vpow.pop %v1741
  %v1743 = vmul.f32 %v1734, 1.442695
  %v1744 = vpow.pop %v1743
  %v1745 = vmul.f32 %v1735, 1.442695
  %v1746 = vpow.pop %v1745
  %v1747 = vmul.f32 %v1736, 1.442695
  %v1748 = vpow.pop %v1747
  %v1749 = vadd.f32 %v1738, 1.0
  %v1750 = vadd.f32 %v1740, 1.0
  %v1751 = vadd.f32 %v1742, 1.0
  %v1752 = vadd.f32 %v1744, 1.0
  %v1753 = vadd.f32 %v1746, 1.0
  %v1754 = vadd.f32 %v1748, 1.0
  %v1755 = vrcp.pop %v1749
  %v1756 = vmul.f32 %v1749, %v1755
  %v1757 = vsub.f32 1.0, %v1756
  %v1758 = vmul.f32 %v1755, %v1757
  %v1759 = vadd.f32 %v1755, %v1758
  %vm1760 = vweird.f32 %v1749
  %vm1761 = vweird.f32 %v1755
  %vm1762 = vmor %vm1760, %vm1761
  %v1763 = vsel %vm1762, %v1755, %v1759
  %v1764 = vand.u32 2147483647, %v1749
  %vm1765 = vcmp.eq.f32.partialorder %v1764, 8.507059e+37
  %v1766 = vand.u32 %v1749, 2147483648
  %v1767 = vor.u32 1.1754944e-38, %v1766
  %v1768 = vsel %vm1765, %v1767, %v1763
  %v1769 = vmul.f32 1.0, %v1768
  %v1770 = vrcp.pop %v1750
  %v1771 = vmul.f32 %v1750, %v1770
  %v1772 = vsub.f32 1.0, %v1771
  %v1773 = vmul.f32 %v1770, %v1772
  %v1774 = vadd.f32 %v1770, %v1773
  %vm1775 = vweird.f32 %v1750
  %vm1776 = vweird.f32 %v1770
  %vm1777 = vmor %vm1775, %vm1776
  %v1778 = vsel %vm1777, %v1770, %v1774
  %v1779 = vand.u32 2147483647, %v1750
  %vm1780 = vcmp.eq.f32.partialorder %v1779, 8.507059e+37
  %v1781 = vand.u32 %v1750, 2147483648
  %v1782 = vor.u32 1.1754944e-38, %v1781
  %v1783 = vsel %vm1780, %v1782, %v1778
  %v1784 = vmul.f32 1.0, %v1783
  %v1785 = vrcp.pop %v1751
  %v1786 = vmul.f32 %v1751, %v1785
  %v1787 = vsub.f32 1.0, %v1786
  %v1788 = vmul.f32 %v1785, %v1787
  %v1789 = vadd.f32 %v1785, %v1788
  %vm1790 = vweird.f32 %v1751
  %vm1791 = vweird.f32 %v1785
  %vm1792 = vmor %vm1790, %vm1791
  %v1793 = vsel %vm1792, %v1785, %v1789
  %v1794 = vand.u32 2147483647, %v1751
  %vm1795 = vcmp.eq.f32.partialorder %v1794, 8.507059e+37
  %v1796 = vand.u32 %v1751, 2147483648
  %v1797 = vor.u32 1.1754944e-38, %v1796
  %v1798 = vsel %vm1795, %v1797, %v1793
  %v1799 = vmul.f32 1.0, %v1798
  %v1800 = vrcp.pop %v1752
  %v1801 = vmul.f32 %v1752, %v1800
  %v1802 = vsub.f32 1.0, %v1801
  %v1803 = vmul.f32 %v1800, %v1802
  %v1804 = vadd.f32 %v1800, %v1803
  %vm1805 = vweird.f32 %v1752
  %vm1806 = vweird.f32 %v1800
  %vm1807 = vmor %vm1805, %vm1806
  %v1808 = vsel %vm1807, %v1800, %v1804
  %v1809 = vand.u32 2147483647, %v1752
  %vm1810 = vcmp.eq.f32.partialorder %v1809, 8.507059e+37
  %v1811 = vand.u32 %v1752, 2147483648
  %v1812 = vor.u32 1.1754944e-38, %v1811
  %v1813 = vsel %vm1810, %v1812, %v1808
  %v1814 = vmul.f32 1.0, %v1813
  %v1815 = vrcp.pop %v1753
  %v1816 = vmul.f32 %v1753, %v1815
  %v1817 = vsub.f32 1.0, %v1816
  %v1818 = vmul.f32 %v1815, %v1817
  %v1819 = vadd.f32 %v1815, %v1818
  %vm1820 = vweird.f32 %v1753
  %vm1821 = vweird.f32 %v1815
  %vm1822 = vmor %vm1820, %vm1821
  %v1823 = vsel %vm1822, %v1815, %v1819
  %v1824 = vand.u32 2147483647, %v1753
  %vm1825 = vcmp.eq.f32.partialorder %v1824, 8.507059e+37
  %v1826 = vand.u32 %v1753, 2147483648
  %v1827 = vor.u32 1.1754944e-38, %v1826
  %v1828 = vsel %vm1825, %v1827, %v1823
  %v1829 = vmul.f32 1.0, %v1828
  %v1830 = vrcp.pop %v1754
  %v1831 = vmul.f32 %v1754, %v1830
  %v1832 = vsub.f32 1.0, %v1831
  %v1833 = vmul.f32 %v1830, %v1832
  %v1834 = vadd.f32 %v1830, %v1833
  %vm1835 = vweird.f32 %v1754
  %vm1836 = vweird.f32 %v1830
  %vm1837 = vmor %vm1835, %vm1836
  %v1838 = vsel %vm1837, %v1830, %v1834
  %v1839 = vand.u32 2147483647, %v1754
  %vm1840 = vcmp.eq.f32.partialorder %v1839, 8.507059e+37
  %v1841 = vand.u32 %v1754, 2147483648
  %v1842 = vor.u32 1.1754944e-38, %v1841
  %v1843 = vsel %vm1840, %v1842, %v1838
  %v1844 = vmul.f32 1.0, %v1843
  %v1845 = vtanh.pop %v1729
  %v1846 = vtanh.pop %v1730
  %v1847 = vmul.f32 %v1799, 0.0
  %v1848 = vmul.f32 %v1814, 0.0
  %v1849 = vmul.f32 %v1769, %v1845
  %v1850 = vmul.f32 %v1784, %v1846
  %v1851 = vadd.f32 %v1847, %v1849
  %v1852 = vadd.f32 %v1848, %v1850
  %v1853 = vtanh.pop %v1851
  %v1854 = vtanh.pop %v1852
  %v1855 = vmul.f32 %v1829, %v1853
  %v1856 = vmul.f32 %v1844, %v1854
  %1857 = vst [vmem:[#allocation3] sm:$0xff] %v1855
  %1858 = vst [vmem:[#allocation3 + $0x8] sm:$0xff] %v1856
  %s1859 = scalar_lea.vmem [#allocation4], 112
  %1860 = vst [vmem:[%s1859] sm:$0xff] %v1855
  %1861 = vst [vmem:[%s1859 + $0x8] sm:$0xff] %v1856
  %v1862 = vmul.f32 %v1855, %v555
  %v1863 = vmul.f32 %v1856, %v555
  %v1864 = vmul.f32 %v1855, %v560
  %v1865 = vmul.f32 %v1856, %v560
  %s1866 = scalar_lea.vmem [#allocation2], 64
  %v1867 = vld [vmem:[%s1866] sm:$0xff]
  %v1868 = vld [vmem:[%s1866 + $0x8] sm:$0xff]
  %v1869 = vld [vmem:[%s1866 + $0x10] sm:$0xff]
  %v1870 = vld [vmem:[%s1866 + $0x18] sm:$0xff]
  %v1871 = vld [vmem:[%s1866 + $0x20] sm:$0xff]
  %v1872 = vld [vmem:[%s1866 + $0x28] sm:$0xff]
  %v1873 = vld [vmem:[%s1866 + $0x30] sm:$0xff]
  %v1874 = vld [vmem:[%s1866 + $0x38] sm:$0xff]
  %v1875 = vld [vmem:[%s2] sm:$0xff]
  %v1876 = vld [vmem:[%s2 + $0x8] sm:$0xff]
  %v1877 = vld [vmem:[%s2 + $0x10] sm:$0xff]
  %v1878 = vld [vmem:[%s2 + $0x18] sm:$0xff]
  %v1879 = vld [vmem:[%s2 + $0x20] sm:$0xff]
  %v1880 = vld [vmem:[%s2 + $0x28] sm:$0xff]
  %v1881 = vld [vmem:[%s2 + $0x30] sm:$0xff]
  %v1882 = vld [vmem:[%s2 + $0x38] sm:$0xff]
  %v1883 = vld [vmem:[%s2 + $0x40] sm:$0xff]
  %v1884 = vld [vmem:[%s2 + $0x48] sm:$0xff]
  %v1885 = vld [vmem:[%s2 + $0x50] sm:$0xff]
  %v1886 = vld [vmem:[%s2 + $0x58] sm:$0xff]
  %v1887 = vld [vmem:[%s2 + $0x60] sm:$0xff]
  %v1888 = vld [vmem:[%s2 + $0x68] sm:$0xff]
  %v1889 = vld [vmem:[%s2 + $0x70] sm:$0xff]
  %v1890 = vld [vmem:[%s2 + $0x78] sm:$0xff]
  %v1891 = vld [vmem:[%s2 + $0x80] sm:$0xff]
  %v1892 = vld [vmem:[%s2 + $0x88] sm:$0xff]
  %v1893 = vld [vmem:[%s2 + $0x90] sm:$0xff]
  %v1894 = vld [vmem:[%s2 + $0x98] sm:$0xff]
  %v1895 = vld [vmem:[%s2 + $0xa0] sm:$0xff]
  %v1896 = vld [vmem:[%s2 + $0xa8] sm:$0xff]
  %v1897 = vld [vmem:[%s2 + $0xb0] sm:$0xff]
  %v1898 = vld [vmem:[%s2 + $0xb8] sm:$0xff]
  %v1899 = vld [vmem:[%s2 + $0xc0] sm:$0xff]
  %v1900 = vld [vmem:[%s2 + $0xc8] sm:$0xff]
  %v1901 = vld [vmem:[%s2 + $0xd0] sm:$0xff]
  %v1902 = vld [vmem:[%s2 + $0xd8] sm:$0xff]
  %v1903 = vld [vmem:[%s2 + $0xe0] sm:$0xff]
  %v1904 = vld [vmem:[%s2 + $0xe8] sm:$0xff]
  %v1905 = vld [vmem:[%s2 + $0xf0] sm:$0xff]
  %v1906 = vld [vmem:[%s2 + $0xf8] sm:$0xff]
  %v1907 = vld [vmem:[%s2 + $0x100] sm:$0xff]
  %v1908 = vld [vmem:[%s2 + $0x108] sm:$0xff]
  %v1909 = vld [vmem:[%s2 + $0x110] sm:$0xff]
  %v1910 = vld [vmem:[%s2 + $0x118] sm:$0xff]
  %v1911 = vld [vmem:[%s2 + $0x120] sm:$0xff]
  %v1912 = vld [vmem:[%s2 + $0x128] sm:$0xff]
  %v1913 = vld [vmem:[%s2 + $0x130] sm:$0xff]
  %v1914 = vld [vmem:[%s2 + $0x138] sm:$0xff]
  %v1915 = vld [vmem:[%s2 + $0x140] sm:$0xff]
  %v1916 = vld [vmem:[%s2 + $0x148] sm:$0xff]
  %v1917 = vld [vmem:[%s2 + $0x150] sm:$0xff]
  %v1918 = vld [vmem:[%s2 + $0x158] sm:$0xff]
  %v1919 = vld [vmem:[%s2 + $0x160] sm:$0xff]
  %v1920 = vld [vmem:[%s2 + $0x168] sm:$0xff]
  %v1921 = vld [vmem:[%s2 + $0x170] sm:$0xff]
  %v1922 = vld [vmem:[%s2 + $0x178] sm:$0xff]
  %v1923 = vld [vmem:[%s2 + $0x180] sm:$0xff]
  %v1924 = vld [vmem:[%s2 + $0x188] sm:$0xff]
  %v1925 = vld [vmem:[%s2 + $0x190] sm:$0xff]
  %v1926 = vld [vmem:[%s2 + $0x198] sm:$0xff]
  %v1927 = vld [vmem:[%s2 + $0x1a0] sm:$0xff]
  %v1928 = vld [vmem:[%s2 + $0x1a8] sm:$0xff]
  %v1929 = vld [vmem:[%s2 + $0x1b0] sm:$0xff]
  %v1930 = vld [vmem:[%s2 + $0x1b8] sm:$0xff]
  %v1931 = vld [vmem:[%s2 + $0x1c0] sm:$0xff]
  %v1932 = vld [vmem:[%s2 + $0x1c8] sm:$0xff]
  %v1933 = vld [vmem:[%s2 + $0x1d0] sm:$0xff]
  %v1934 = vld [vmem:[%s2 + $0x1d8] sm:$0xff]
  %v1935 = vld [vmem:[%s2 + $0x1e0] sm:$0xff]
  %v1936 = vld [vmem:[%s2 + $0x1e8] sm:$0xff]
  %v1937 = vld [vmem:[%s2 + $0x1f0] sm:$0xff]
  %v1938 = vld [vmem:[%s2 + $0x1f8] sm:$0xff]
  %v1939 = vld [vmem:[%s2 + $0x200] sm:$0xff]
  %v1940 = vld [vmem:[%s2 + $0x208] sm:$0xff]
  %v1941 = vld [vmem:[%s2 + $0x210] sm:$0xff]
  %v1942 = vld [vmem:[%s2 + $0x218] sm:$0xff]
  %v1943 = vld [vmem:[%s2 + $0x220] sm:$0xff]
  %v1944 = vld [vmem:[%s2 + $0x228] sm:$0xff]
  %v1945 = vld [vmem:[%s2 + $0x230] sm:$0xff]
  %v1946 = vld [vmem:[%s2 + $0x238] sm:$0xff]
  %v1947 = vld [vmem:[%s2 + $0x240] sm:$0xff]
  %v1948 = vld [vmem:[%s2 + $0x248] sm:$0xff]
  %v1949 = vld [vmem:[%s2 + $0x250] sm:$0xff]
  %v1950 = vld [vmem:[%s2 + $0x258] sm:$0xff]
  %v1951 = vld [vmem:[%s2 + $0x260] sm:$0xff]
  %v1952 = vld [vmem:[%s2 + $0x268] sm:$0xff]
  %v1953 = vld [vmem:[%s2 + $0x270] sm:$0xff]
  %v1954 = vld [vmem:[%s2 + $0x278] sm:$0xff]
  %v1955 = vld [vmem:[%s2 + $0x280] sm:$0xff]
  %v1956 = vld [vmem:[%s2 + $0x288] sm:$0xff]
  %v1957 = vld [vmem:[%s2 + $0x290] sm:$0xff]
  %v1958 = vld [vmem:[%s2 + $0x298] sm:$0xff]
  %v1959 = vld [vmem:[%s2 + $0x2a0] sm:$0xff]
  %v1960 = vld [vmem:[%s2 + $0x2a8] sm:$0xff]
  %v1961 = vld [vmem:[%s2 + $0x2b0] sm:$0xff]
  %v1962 = vld [vmem:[%s2 + $0x2b8] sm:$0xff]
  %v1963 = vld [vmem:[%s2 + $0x2c0] sm:$0xff]
  %v1964 = vld [vmem:[%s2 + $0x2c8] sm:$0xff]
  %v1965 = vld [vmem:[%s2 + $0x2d0] sm:$0xff]
  %v1966 = vld [vmem:[%s2 + $0x2d8] sm:$0xff]
  %v1967 = vld [vmem:[%s2 + $0x2e0] sm:$0xff]
  %v1968 = vld [vmem:[%s2 + $0x2e8] sm:$0xff]
  %v1969 = vld [vmem:[%s2 + $0x2f0] sm:$0xff]
  %v1970 = vld [vmem:[%s2 + $0x2f8] sm:$0xff]
  %v1971 = vld [vmem:[%s2 + $0x300] sm:$0xff]
  %v1972 = vld [vmem:[%s2 + $0x308] sm:$0xff]
  %v1973 = vld [vmem:[%s2 + $0x310] sm:$0xff]
  %v1974 = vld [vmem:[%s2 + $0x318] sm:$0xff]
  %v1975 = vld [vmem:[%s2 + $0x320] sm:$0xff]
  %v1976 = vld [vmem:[%s2 + $0x328] sm:$0xff]
  %v1977 = vld [vmem:[%s2 + $0x330] sm:$0xff]
  %v1978 = vld [vmem:[%s2 + $0x338] sm:$0xff]
  %v1979 = vld [vmem:[%s2 + $0x340] sm:$0xff]
  %v1980 = vld [vmem:[%s2 + $0x348] sm:$0xff]
  %v1981 = vld [vmem:[%s2 + $0x350] sm:$0xff]
  %v1982 = vld [vmem:[%s2 + $0x358] sm:$0xff]
  %v1983 = vld [vmem:[%s2 + $0x360] sm:$0xff]
  %v1984 = vld [vmem:[%s2 + $0x368] sm:$0xff]
  %v1985 = vld [vmem:[%s2 + $0x370] sm:$0xff]
  %v1986 = vld [vmem:[%s2 + $0x378] sm:$0xff]
  %v1987 = vld [vmem:[%s2 + $0x380] sm:$0xff]
  %v1988 = vld [vmem:[%s2 + $0x388] sm:$0xff]
  %v1989 = vld [vmem:[%s2 + $0x390] sm:$0xff]
  %v1990 = vld [vmem:[%s2 + $0x398] sm:$0xff]
  %v1991 = vld [vmem:[%s2 + $0x3a0] sm:$0xff]
  %v1992 = vld [vmem:[%s2 + $0x3a8] sm:$0xff]
  %v1993 = vld [vmem:[%s2 + $0x3b0] sm:$0xff]
  %v1994 = vld [vmem:[%s2 + $0x3b8] sm:$0xff]
  %v1995 = vld [vmem:[%s2 + $0x3c0] sm:$0xff]
  %v1996 = vld [vmem:[%s2 + $0x3c8] sm:$0xff]
  %v1997 = vld [vmem:[%s2 + $0x3d0] sm:$0xff]
  %v1998 = vld [vmem:[%s2 + $0x3d8] sm:$0xff]
  %v1999 = vld [vmem:[%s2 + $0x3e0] sm:$0xff]
  %v2000 = vld [vmem:[%s2 + $0x3e8] sm:$0xff]
  %v2001 = vld [vmem:[%s2 + $0x3f0] sm:$0xff]
  %v2002 = vld [vmem:[%s2 + $0x3f8] sm:$0xff]
  %v2003 = vld [vmem:[%s2 + $0x400] sm:$0xff]
  %v2004 = vld [vmem:[%s2 + $0x408] sm:$0xff]
  %v2005 = vld [vmem:[%s2 + $0x410] sm:$0xff]
  %v2006 = vld [vmem:[%s2 + $0x418] sm:$0xff]
  %v2007 = vld [vmem:[%s2 + $0x420] sm:$0xff]
  %v2008 = vld [vmem:[%s2 + $0x428] sm:$0xff]
  %v2009 = vld [vmem:[%s2 + $0x430] sm:$0xff]
  %v2010 = vld [vmem:[%s2 + $0x438] sm:$0xff]
  %v2011 = vld [vmem:[%s2 + $0x440] sm:$0xff]
  %v2012 = vld [vmem:[%s2 + $0x448] sm:$0xff]
  %v2013 = vld [vmem:[%s2 + $0x450] sm:$0xff]
  %v2014 = vld [vmem:[%s2 + $0x458] sm:$0xff]
  %v2015 = vld [vmem:[%s2 + $0x460] sm:$0xff]
  %v2016 = vld [vmem:[%s2 + $0x468] sm:$0xff]
  %v2017 = vld [vmem:[%s2 + $0x470] sm:$0xff]
  %v2018 = vld [vmem:[%s2 + $0x478] sm:$0xff]
  %v2019 = vld [vmem:[%s2 + $0x480] sm:$0xff]
  %v2020 = vld [vmem:[%s2 + $0x488] sm:$0xff]
  %v2021 = vld [vmem:[%s2 + $0x490] sm:$0xff]
  %v2022 = vld [vmem:[%s2 + $0x498] sm:$0xff]
  %v2023 = vld [vmem:[%s2 + $0x4a0] sm:$0xff]
  %v2024 = vld [vmem:[%s2 + $0x4a8] sm:$0xff]
  %v2025 = vld [vmem:[%s2 + $0x4b0] sm:$0xff]
  %v2026 = vld [vmem:[%s2 + $0x4b8] sm:$0xff]
  %v2027 = vld [vmem:[%s2 + $0x4c0] sm:$0xff]
  %v2028 = vld [vmem:[%s2 + $0x4c8] sm:$0xff]
  %v2029 = vld [vmem:[%s2 + $0x4d0] sm:$0xff]
  %v2030 = vld [vmem:[%s2 + $0x4d8] sm:$0xff]
  %v2031 = vld [vmem:[%s2 + $0x4e0] sm:$0xff]
  %v2032 = vld [vmem:[%s2 + $0x4e8] sm:$0xff]
  %v2033 = vld [vmem:[%s2 + $0x4f0] sm:$0xff]
  %v2034 = vld [vmem:[%s2 + $0x4f8] sm:$0xff]
  %v2035 = vld [vmem:[%s2 + $0x500] sm:$0xff]
  %v2036 = vld [vmem:[%s2 + $0x508] sm:$0xff]
  %v2037 = vld [vmem:[%s2 + $0x510] sm:$0xff]
  %v2038 = vld [vmem:[%s2 + $0x518] sm:$0xff]
  %v2039 = vld [vmem:[%s2 + $0x520] sm:$0xff]
  %v2040 = vld [vmem:[%s2 + $0x528] sm:$0xff]
  %v2041 = vld [vmem:[%s2 + $0x530] sm:$0xff]
  %v2042 = vld [vmem:[%s2 + $0x538] sm:$0xff]
  %v2043 = vld [vmem:[%s2 + $0x540] sm:$0xff]
  %v2044 = vld [vmem:[%s2 + $0x548] sm:$0xff]
  %v2045 = vld [vmem:[%s2 + $0x550] sm:$0xff]
  %v2046 = vld [vmem:[%s2 + $0x558] sm:$0xff]
  %v2047 = vld [vmem:[%s2 + $0x560] sm:$0xff]
  %v2048 = vld [vmem:[%s2 + $0x568] sm:$0xff]
  %v2049 = vld [vmem:[%s2 + $0x570] sm:$0xff]
  %v2050 = vld [vmem:[%s2 + $0x578] sm:$0xff]
  %v2051 = vld [vmem:[%s2 + $0x580] sm:$0xff]
  %v2052 = vld [vmem:[%s2 + $0x588] sm:$0xff]
  %v2053 = vld [vmem:[%s2 + $0x590] sm:$0xff]
  %v2054 = vld [vmem:[%s2 + $0x598] sm:$0xff]
  %v2055 = vld [vmem:[%s2 + $0x5a0] sm:$0xff]
  %v2056 = vld [vmem:[%s2 + $0x5a8] sm:$0xff]
  %v2057 = vld [vmem:[%s2 + $0x5b0] sm:$0xff]
  %v2058 = vld [vmem:[%s2 + $0x5b8] sm:$0xff]
  %v2059 = vld [vmem:[%s2 + $0x5c0] sm:$0xff]
  %v2060 = vld [vmem:[%s2 + $0x5c8] sm:$0xff]
  %v2061 = vld [vmem:[%s2 + $0x5d0] sm:$0xff]
  %v2062 = vld [vmem:[%s2 + $0x5d8] sm:$0xff]
  %v2063 = vld [vmem:[%s2 + $0x5e0] sm:$0xff]
  %v2064 = vld [vmem:[%s2 + $0x5e8] sm:$0xff]
  %v2065 = vld [vmem:[%s2 + $0x5f0] sm:$0xff]
  %v2066 = vld [vmem:[%s2 + $0x5f8] sm:$0xff]
  %v2067 = vld [vmem:[%s2 + $0x600] sm:$0xff]
  %v2068 = vld [vmem:[%s2 + $0x608] sm:$0xff]
  %v2069 = vld [vmem:[%s2 + $0x610] sm:$0xff]
  %v2070 = vld [vmem:[%s2 + $0x618] sm:$0xff]
  %v2071 = vld [vmem:[%s2 + $0x620] sm:$0xff]
  %v2072 = vld [vmem:[%s2 + $0x628] sm:$0xff]
  %v2073 = vld [vmem:[%s2 + $0x630] sm:$0xff]
  %v2074 = vld [vmem:[%s2 + $0x638] sm:$0xff]
  %v2075 = vld [vmem:[%s2 + $0x640] sm:$0xff]
  %v2076 = vld [vmem:[%s2 + $0x648] sm:$0xff]
  %v2077 = vld [vmem:[%s2 + $0x650] sm:$0xff]
  %v2078 = vld [vmem:[%s2 + $0x658] sm:$0xff]
  %v2079 = vld [vmem:[%s2 + $0x660] sm:$0xff]
  %v2080 = vld [vmem:[%s2 + $0x668] sm:$0xff]
  %v2081 = vld [vmem:[%s2 + $0x670] sm:$0xff]
  %v2082 = vld [vmem:[%s2 + $0x678] sm:$0xff]
  %v2083 = vld [vmem:[%s2 + $0x680] sm:$0xff]
  %v2084 = vld [vmem:[%s2 + $0x688] sm:$0xff]
  %v2085 = vld [vmem:[%s2 + $0x690] sm:$0xff]
  %v2086 = vld [vmem:[%s2 + $0x698] sm:$0xff]
  %v2087 = vld [vmem:[%s2 + $0x6a0] sm:$0xff]
  %v2088 = vld [vmem:[%s2 + $0x6a8] sm:$0xff]
  %v2089 = vld [vmem:[%s2 + $0x6b0] sm:$0xff]
  %v2090 = vld [vmem:[%s2 + $0x6b8] sm:$0xff]
  %v2091 = vld [vmem:[%s2 + $0x6c0] sm:$0xff]
  %v2092 = vld [vmem:[%s2 + $0x6c8] sm:$0xff]
  %v2093 = vld [vmem:[%s2 + $0x6d0] sm:$0xff]
  %v2094 = vld [vmem:[%s2 + $0x6d8] sm:$0xff]
  %v2095 = vld [vmem:[%s2 + $0x6e0] sm:$0xff]
  %v2096 = vld [vmem:[%s2 + $0x6e8] sm:$0xff]
  %v2097 = vld [vmem:[%s2 + $0x6f0] sm:$0xff]
  %v2098 = vld [vmem:[%s2 + $0x6f8] sm:$0xff]
  %v2099 = vld [vmem:[%s2 + $0x700] sm:$0xff]
  %v2100 = vld [vmem:[%s2 + $0x708] sm:$0xff]
  %v2101 = vld [vmem:[%s2 + $0x710] sm:$0xff]
  %v2102 = vld [vmem:[%s2 + $0x718] sm:$0xff]
  %v2103 = vld [vmem:[%s2 + $0x720] sm:$0xff]
  %v2104 = vld [vmem:[%s2 + $0x728] sm:$0xff]
  %v2105 = vld [vmem:[%s2 + $0x730] sm:$0xff]
  %v2106 = vld [vmem:[%s2 + $0x738] sm:$0xff]
  %v2107 = vld [vmem:[%s2 + $0x740] sm:$0xff]
  %v2108 = vld [vmem:[%s2 + $0x748] sm:$0xff]
  %v2109 = vld [vmem:[%s2 + $0x750] sm:$0xff]
  %v2110 = vld [vmem:[%s2 + $0x758] sm:$0xff]
  %v2111 = vld [vmem:[%s2 + $0x760] sm:$0xff]
  %v2112 = vld [vmem:[%s2 + $0x768] sm:$0xff]
  %v2113 = vld [vmem:[%s2 + $0x770] sm:$0xff]
  %v2114 = vld [vmem:[%s2 + $0x778] sm:$0xff]
  %v2115 = vld [vmem:[%s2 + $0x780] sm:$0xff]
  %v2116 = vld [vmem:[%s2 + $0x788] sm:$0xff]
  %v2117 = vld [vmem:[%s2 + $0x790] sm:$0xff]
  %v2118 = vld [vmem:[%s2 + $0x798] sm:$0xff]
  %v2119 = vld [vmem:[%s2 + $0x7a0] sm:$0xff]
  %v2120 = vld [vmem:[%s2 + $0x7a8] sm:$0xff]
  %v2121 = vld [vmem:[%s2 + $0x7b0] sm:$0xff]
  %v2122 = vld [vmem:[%s2 + $0x7b8] sm:$0xff]
  %v2123 = vld [vmem:[%s2 + $0x7c0] sm:$0xff]
  %v2124 = vld [vmem:[%s2 + $0x7c8] sm:$0xff]
  %v2125 = vld [vmem:[%s2 + $0x7d0] sm:$0xff]
  %v2126 = vld [vmem:[%s2 + $0x7d8] sm:$0xff]
  %v2127 = vld [vmem:[%s2 + $0x7e0] sm:$0xff]
  %v2128 = vld [vmem:[%s2 + $0x7e8] sm:$0xff]
  %v2129 = vld [vmem:[%s2 + $0x7f0] sm:$0xff]
  %v2130 = vld [vmem:[%s2 + $0x7f8] sm:$0xff]
  %v2131 = vld [vmem:[%s2 + $0x800] sm:$0xff]
  %v2132 = vld [vmem:[%s2 + $0x808] sm:$0xff]
  %v2133 = vld [vmem:[%s2 + $0x810] sm:$0xff]
  %v2134 = vld [vmem:[%s2 + $0x818] sm:$0xff]
  %v2135 = vld [vmem:[%s2 + $0x820] sm:$0xff]
  %v2136 = vld [vmem:[%s2 + $0x828] sm:$0xff]
  %v2137 = vld [vmem:[%s2 + $0x830] sm:$0xff]
  %v2138 = vld [vmem:[%s2 + $0x838] sm:$0xff]
  %v2139 = vld [vmem:[%s2 + $0x840] sm:$0xff]
  %v2140 = vld [vmem:[%s2 + $0x848] sm:$0xff]
  %v2141 = vld [vmem:[%s2 + $0x850] sm:$0xff]
  %v2142 = vld [vmem:[%s2 + $0x858] sm:$0xff]
  %v2143 = vld [vmem:[%s2 + $0x860] sm:$0xff]
  %v2144 = vld [vmem:[%s2 + $0x868] sm:$0xff]
  %v2145 = vld [vmem:[%s2 + $0x870] sm:$0xff]
  %v2146 = vld [vmem:[%s2 + $0x878] sm:$0xff]
  %v2147 = vld [vmem:[%s2 + $0x880] sm:$0xff]
  %v2148 = vld [vmem:[%s2 + $0x888] sm:$0xff]
  %v2149 = vld [vmem:[%s2 + $0x890] sm:$0xff]
  %v2150 = vld [vmem:[%s2 + $0x898] sm:$0xff]
  %v2151 = vld [vmem:[%s2 + $0x8a0] sm:$0xff]
  %v2152 = vld [vmem:[%s2 + $0x8a8] sm:$0xff]
  %v2153 = vld [vmem:[%s2 + $0x8b0] sm:$0xff]
  %v2154 = vld [vmem:[%s2 + $0x8b8] sm:$0xff]
  %v2155 = vld [vmem:[%s2 + $0x8c0] sm:$0xff]
  %v2156 = vld [vmem:[%s2 + $0x8c8] sm:$0xff]
  %v2157 = vld [vmem:[%s2 + $0x8d0] sm:$0xff]
  %v2158 = vld [vmem:[%s2 + $0x8d8] sm:$0xff]
  %v2159 = vld [vmem:[%s2 + $0x8e0] sm:$0xff]
  %v2160 = vld [vmem:[%s2 + $0x8e8] sm:$0xff]
  %v2161 = vld [vmem:[%s2 + $0x8f0] sm:$0xff]
  %v2162 = vld [vmem:[%s2 + $0x8f8] sm:$0xff]
  %v2163 = vld [vmem:[%s2 + $0x900] sm:$0xff]
  %v2164 = vld [vmem:[%s2 + $0x908] sm:$0xff]
  %v2165 = vld [vmem:[%s2 + $0x910] sm:$0xff]
  %v2166 = vld [vmem:[%s2 + $0x918] sm:$0xff]
  %v2167 = vld [vmem:[%s2 + $0x920] sm:$0xff]
  %v2168 = vld [vmem:[%s2 + $0x928] sm:$0xff]
  %v2169 = vld [vmem:[%s2 + $0x930] sm:$0xff]
  %v2170 = vld [vmem:[%s2 + $0x938] sm:$0xff]
  %v2171 = vld [vmem:[%s2 + $0x940] sm:$0xff]
  %v2172 = vld [vmem:[%s2 + $0x948] sm:$0xff]
  %v2173 = vld [vmem:[%s2 + $0x950] sm:$0xff]
  %v2174 = vld [vmem:[%s2 + $0x958] sm:$0xff]
  %v2175 = vld [vmem:[%s2 + $0x960] sm:$0xff]
  %v2176 = vld [vmem:[%s2 + $0x968] sm:$0xff]
  %v2177 = vld [vmem:[%s2 + $0x970] sm:$0xff]
  %v2178 = vld [vmem:[%s2 + $0x978] sm:$0xff]
  %v2179 = vld [vmem:[%s2 + $0x980] sm:$0xff]
  %v2180 = vld [vmem:[%s2 + $0x988] sm:$0xff]
  %v2181 = vld [vmem:[%s2 + $0x990] sm:$0xff]
  %v2182 = vld [vmem:[%s2 + $0x998] sm:$0xff]
  %v2183 = vld [vmem:[%s2 + $0x9a0] sm:$0xff]
  %v2184 = vld [vmem:[%s2 + $0x9a8] sm:$0xff]
  %v2185 = vld [vmem:[%s2 + $0x9b0] sm:$0xff]
  %v2186 = vld [vmem:[%s2 + $0x9b8] sm:$0xff]
  %v2187 = vld [vmem:[%s2 + $0x9c0] sm:$0xff]
  %v2188 = vld [vmem:[%s2 + $0x9c8] sm:$0xff]
  %v2189 = vld [vmem:[%s2 + $0x9d0] sm:$0xff]
  %v2190 = vld [vmem:[%s2 + $0x9d8] sm:$0xff]
  %v2191 = vld [vmem:[%s2 + $0x9e0] sm:$0xff]
  %v2192 = vld [vmem:[%s2 + $0x9e8] sm:$0xff]
  %v2193 = vld [vmem:[%s2 + $0x9f0] sm:$0xff]
  %v2194 = vld [vmem:[%s2 + $0x9f8] sm:$0xff]
  %v2195 = vld [vmem:[%s2 + $0xa00] sm:$0xff]
  %v2196 = vld [vmem:[%s2 + $0xa08] sm:$0xff]
  %v2197 = vld [vmem:[%s2 + $0xa10] sm:$0xff]
  %v2198 = vld [vmem:[%s2 + $0xa18] sm:$0xff]
  %v2199 = vld [vmem:[%s2 + $0xa20] sm:$0xff]
  %v2200 = vld [vmem:[%s2 + $0xa28] sm:$0xff]
  %v2201 = vld [vmem:[%s2 + $0xa30] sm:$0xff]
  %v2202 = vld [vmem:[%s2 + $0xa38] sm:$0xff]
  %v2203 = vld [vmem:[%s2 + $0xa40] sm:$0xff]
  %v2204 = vld [vmem:[%s2 + $0xa48] sm:$0xff]
  %v2205 = vld [vmem:[%s2 + $0xa50] sm:$0xff]
  %v2206 = vld [vmem:[%s2 + $0xa58] sm:$0xff]
  %v2207 = vld [vmem:[%s2 + $0xa60] sm:$0xff]
  %v2208 = vld [vmem:[%s2 + $0xa68] sm:$0xff]
  %v2209 = vld [vmem:[%s2 + $0xa70] sm:$0xff]
  %v2210 = vld [vmem:[%s2 + $0xa78] sm:$0xff]
  %v2211 = vld [vmem:[%s2 + $0xa80] sm:$0xff]
  %v2212 = vld [vmem:[%s2 + $0xa88] sm:$0xff]
  %v2213 = vld [vmem:[%s2 + $0xa90] sm:$0xff]
  %v2214 = vld [vmem:[%s2 + $0xa98] sm:$0xff]
  %v2215 = vld [vmem:[%s2 + $0xaa0] sm:$0xff]
  %v2216 = vld [vmem:[%s2 + $0xaa8] sm:$0xff]
  %v2217 = vld [vmem:[%s2 + $0xab0] sm:$0xff]
  %v2218 = vld [vmem:[%s2 + $0xab8] sm:$0xff]
  %v2219 = vld [vmem:[%s2 + $0xac0] sm:$0xff]
  %v2220 = vld [vmem:[%s2 + $0xac8] sm:$0xff]
  %v2221 = vld [vmem:[%s2 + $0xad0] sm:$0xff]
  %v2222 = vld [vmem:[%s2 + $0xad8] sm:$0xff]
  %v2223 = vld [vmem:[%s2 + $0xae0] sm:$0xff]
  %v2224 = vld [vmem:[%s2 + $0xae8] sm:$0xff]
  %v2225 = vld [vmem:[%s2 + $0xaf0] sm:$0xff]
  %v2226 = vld [vmem:[%s2 + $0xaf8] sm:$0xff]
  %v2227 = vld [vmem:[%s2 + $0xb00] sm:$0xff]
  %v2228 = vld [vmem:[%s2 + $0xb08] sm:$0xff]
  %v2229 = vld [vmem:[%s2 + $0xb10] sm:$0xff]
  %v2230 = vld [vmem:[%s2 + $0xb18] sm:$0xff]
  %v2231 = vld [vmem:[%s2 + $0xb20] sm:$0xff]
  %v2232 = vld [vmem:[%s2 + $0xb28] sm:$0xff]
  %v2233 = vld [vmem:[%s2 + $0xb30] sm:$0xff]
  %v2234 = vld [vmem:[%s2 + $0xb38] sm:$0xff]
  %v2235 = vld [vmem:[%s2 + $0xb40] sm:$0xff]
  %v2236 = vld [vmem:[%s2 + $0xb48] sm:$0xff]
  %v2237 = vld [vmem:[%s2 + $0xb50] sm:$0xff]
  %v2238 = vld [vmem:[%s2 + $0xb58] sm:$0xff]
  %v2239 = vld [vmem:[%s2 + $0xb60] sm:$0xff]
  %v2240 = vld [vmem:[%s2 + $0xb68] sm:$0xff]
  %v2241 = vld [vmem:[%s2 + $0xb70] sm:$0xff]
  %v2242 = vld [vmem:[%s2 + $0xb78] sm:$0xff]
  %v2243 = vld [vmem:[%s2 + $0xb80] sm:$0xff]
  %v2244 = vld [vmem:[%s2 + $0xb88] sm:$0xff]
  %v2245 = vld [vmem:[%s2 + $0xb90] sm:$0xff]
  %v2246 = vld [vmem:[%s2 + $0xb98] sm:$0xff]
  %v2247 = vld [vmem:[%s2 + $0xba0] sm:$0xff]
  %v2248 = vld [vmem:[%s2 + $0xba8] sm:$0xff]
  %v2249 = vld [vmem:[%s2 + $0xbb0] sm:$0xff]
  %v2250 = vld [vmem:[%s2 + $0xbb8] sm:$0xff]
  %v2251 = vld [vmem:[%s2 + $0xbc0] sm:$0xff]
  %v2252 = vld [vmem:[%s2 + $0xbc8] sm:$0xff]
  %v2253 = vld [vmem:[%s2 + $0xbd0] sm:$0xff]
  %v2254 = vld [vmem:[%s2 + $0xbd8] sm:$0xff]
  %v2255 = vld [vmem:[%s2 + $0xbe0] sm:$0xff]
  %v2256 = vld [vmem:[%s2 + $0xbe8] sm:$0xff]
  %v2257 = vld [vmem:[%s2 + $0xbf0] sm:$0xff]
  %v2258 = vld [vmem:[%s2 + $0xbf8] sm:$0xff]
  %v2259 = vld [vmem:[%s2 + $0xc00] sm:$0xff]
  %v2260 = vld [vmem:[%s2 + $0xc08] sm:$0xff]
  %v2261 = vld [vmem:[%s2 + $0xc10] sm:$0xff]
  %v2262 = vld [vmem:[%s2 + $0xc18] sm:$0xff]
  %v2263 = vld [vmem:[%s2 + $0xc20] sm:$0xff]
  %v2264 = vld [vmem:[%s2 + $0xc28] sm:$0xff]
  %v2265 = vld [vmem:[%s2 + $0xc30] sm:$0xff]
  %v2266 = vld [vmem:[%s2 + $0xc38] sm:$0xff]
  %v2267 = vld [vmem:[%s2 + $0xc40] sm:$0xff]
  %v2268 = vld [vmem:[%s2 + $0xc48] sm:$0xff]
  %v2269 = vld [vmem:[%s2 + $0xc50] sm:$0xff]
  %v2270 = vld [vmem:[%s2 + $0xc58] sm:$0xff]
  %v2271 = vld [vmem:[%s2 + $0xc60] sm:$0xff]
  %v2272 = vld [vmem:[%s2 + $0xc68] sm:$0xff]
  %v2273 = vld [vmem:[%s2 + $0xc70] sm:$0xff]
  %v2274 = vld [vmem:[%s2 + $0xc78] sm:$0xff]
  %v2275 = vld [vmem:[%s2 + $0xc80] sm:$0xff]
  %v2276 = vld [vmem:[%s2 + $0xc88] sm:$0xff]
  %v2277 = vld [vmem:[%s2 + $0xc90] sm:$0xff]
  %v2278 = vld [vmem:[%s2 + $0xc98] sm:$0xff]
  %v2279 = vld [vmem:[%s2 + $0xca0] sm:$0xff]
  %v2280 = vld [vmem:[%s2 + $0xca8] sm:$0xff]
  %v2281 = vld [vmem:[%s2 + $0xcb0] sm:$0xff]
  %v2282 = vld [vmem:[%s2 + $0xcb8] sm:$0xff]
  %v2283 = vld [vmem:[%s2 + $0xcc0] sm:$0xff]
  %v2284 = vld [vmem:[%s2 + $0xcc8] sm:$0xff]
  %v2285 = vld [vmem:[%s2 + $0xcd0] sm:$0xff]
  %v2286 = vld [vmem:[%s2 + $0xcd8] sm:$0xff]
  %v2287 = vld [vmem:[%s2 + $0xce0] sm:$0xff]
  %v2288 = vld [vmem:[%s2 + $0xce8] sm:$0xff]
  %v2289 = vld [vmem:[%s2 + $0xcf0] sm:$0xff]
  %v2290 = vld [vmem:[%s2 + $0xcf8] sm:$0xff]
  %v2291 = vld [vmem:[%s2 + $0xd00] sm:$0xff]
  %v2292 = vld [vmem:[%s2 + $0xd08] sm:$0xff]
  %v2293 = vld [vmem:[%s2 + $0xd10] sm:$0xff]
  %v2294 = vld [vmem:[%s2 + $0xd18] sm:$0xff]
  %v2295 = vld [vmem:[%s2 + $0xd20] sm:$0xff]
  %v2296 = vld [vmem:[%s2 + $0xd28] sm:$0xff]
  %v2297 = vld [vmem:[%s2 + $0xd30] sm:$0xff]
  %v2298 = vld [vmem:[%s2 + $0xd38] sm:$0xff]
  %v2299 = vld [vmem:[%s2 + $0xd40] sm:$0xff]
  %v2300 = vld [vmem:[%s2 + $0xd48] sm:$0xff]
  %v2301 = vld [vmem:[%s2 + $0xd50] sm:$0xff]
  %v2302 = vld [vmem:[%s2 + $0xd58] sm:$0xff]
  %v2303 = vld [vmem:[%s2 + $0xd60] sm:$0xff]
  %v2304 = vld [vmem:[%s2 + $0xd68] sm:$0xff]
  %v2305 = vld [vmem:[%s2 + $0xd70] sm:$0xff]
  %v2306 = vld [vmem:[%s2 + $0xd78] sm:$0xff]
  %v2307 = vld [vmem:[%s2 + $0xd80] sm:$0xff]
  %v2308 = vld [vmem:[%s2 + $0xd88] sm:$0xff]
  %v2309 = vld [vmem:[%s2 + $0xd90] sm:$0xff]
  %v2310 = vld [vmem:[%s2 + $0xd98] sm:$0xff]
  %v2311 = vld [vmem:[%s2 + $0xda0] sm:$0xff]
  %v2312 = vld [vmem:[%s2 + $0xda8] sm:$0xff]
  %v2313 = vld [vmem:[%s2 + $0xdb0] sm:$0xff]
  %v2314 = vld [vmem:[%s2 + $0xdb8] sm:$0xff]
  %v2315 = vld [vmem:[%s2 + $0xdc0] sm:$0xff]
  %v2316 = vld [vmem:[%s2 + $0xdc8] sm:$0xff]
  %v2317 = vld [vmem:[%s2 + $0xdd0] sm:$0xff]
  %v2318 = vld [vmem:[%s2 + $0xdd8] sm:$0xff]
  %v2319 = vld [vmem:[%s2 + $0xde0] sm:$0xff]
  %v2320 = vld [vmem:[%s2 + $0xde8] sm:$0xff]
  %v2321 = vld [vmem:[%s2 + $0xdf0] sm:$0xff]
  %v2322 = vld [vmem:[%s2 + $0xdf8] sm:$0xff]
  %v2323 = vld [vmem:[%s2 + $0xe00] sm:$0xff]
  %v2324 = vld [vmem:[%s2 + $0xe08] sm:$0xff]
  %v2325 = vld [vmem:[%s2 + $0xe10] sm:$0xff]
  %v2326 = vld [vmem:[%s2 + $0xe18] sm:$0xff]
  %v2327 = vld [vmem:[%s2 + $0xe20] sm:$0xff]
  %v2328 = vld [vmem:[%s2 + $0xe28] sm:$0xff]
  %v2329 = vld [vmem:[%s2 + $0xe30] sm:$0xff]
  %v2330 = vld [vmem:[%s2 + $0xe38] sm:$0xff]
  %v2331 = vld [vmem:[%s2 + $0xe40] sm:$0xff]
  %v2332 = vld [vmem:[%s2 + $0xe48] sm:$0xff]
  %v2333 = vld [vmem:[%s2 + $0xe50] sm:$0xff]
  %v2334 = vld [vmem:[%s2 + $0xe58] sm:$0xff]
  %v2335 = vld [vmem:[%s2 + $0xe60] sm:$0xff]
  %v2336 = vld [vmem:[%s2 + $0xe68] sm:$0xff]
  %v2337 = vld [vmem:[%s2 + $0xe70] sm:$0xff]
  %v2338 = vld [vmem:[%s2 + $0xe78] sm:$0xff]
  %v2339 = vld [vmem:[%s2 + $0xe80] sm:$0xff]
  %v2340 = vld [vmem:[%s2 + $0xe88] sm:$0xff]
  %v2341 = vld [vmem:[%s2 + $0xe90] sm:$0xff]
  %v2342 = vld [vmem:[%s2 + $0xe98] sm:$0xff]
  %v2343 = vld [vmem:[%s2 + $0xea0] sm:$0xff]
  %v2344 = vld [vmem:[%s2 + $0xea8] sm:$0xff]
  %v2345 = vld [vmem:[%s2 + $0xeb0] sm:$0xff]
  %v2346 = vld [vmem:[%s2 + $0xeb8] sm:$0xff]
  %v2347 = vld [vmem:[%s2 + $0xec0] sm:$0xff]
  %v2348 = vld [vmem:[%s2 + $0xec8] sm:$0xff]
  %v2349 = vld [vmem:[%s2 + $0xed0] sm:$0xff]
  %v2350 = vld [vmem:[%s2 + $0xed8] sm:$0xff]
  %v2351 = vld [vmem:[%s2 + $0xee0] sm:$0xff]
  %v2352 = vld [vmem:[%s2 + $0xee8] sm:$0xff]
  %v2353 = vld [vmem:[%s2 + $0xef0] sm:$0xff]
  %v2354 = vld [vmem:[%s2 + $0xef8] sm:$0xff]
  %v2355 = vld [vmem:[%s2 + $0xf00] sm:$0xff]
  %v2356 = vld [vmem:[%s2 + $0xf08] sm:$0xff]
  %v2357 = vld [vmem:[%s2 + $0xf10] sm:$0xff]
  %v2358 = vld [vmem:[%s2 + $0xf18] sm:$0xff]
  %v2359 = vld [vmem:[%s2 + $0xf20] sm:$0xff]
  %v2360 = vld [vmem:[%s2 + $0xf28] sm:$0xff]
  %v2361 = vld [vmem:[%s2 + $0xf30] sm:$0xff]
  %v2362 = vld [vmem:[%s2 + $0xf38] sm:$0xff]
  %v2363 = vld [vmem:[%s2 + $0xf40] sm:$0xff]
  %v2364 = vld [vmem:[%s2 + $0xf48] sm:$0xff]
  %v2365 = vld [vmem:[%s2 + $0xf50] sm:$0xff]
  %v2366 = vld [vmem:[%s2 + $0xf58] sm:$0xff]
  %v2367 = vld [vmem:[%s2 + $0xf60] sm:$0xff]
  %v2368 = vld [vmem:[%s2 + $0xf68] sm:$0xff]
  %v2369 = vld [vmem:[%s2 + $0xf70] sm:$0xff]
  %v2370 = vld [vmem:[%s2 + $0xf78] sm:$0xff]
  %v2371 = vld [vmem:[%s2 + $0xf80] sm:$0xff]
  %v2372 = vld [vmem:[%s2 + $0xf88] sm:$0xff]
  %v2373 = vld [vmem:[%s2 + $0xf90] sm:$0xff]
  %v2374 = vld [vmem:[%s2 + $0xf98] sm:$0xff]
  %v2375 = vld [vmem:[%s2 + $0xfa0] sm:$0xff]
  %v2376 = vld [vmem:[%s2 + $0xfa8] sm:$0xff]
  %v2377 = vld [vmem:[%s2 + $0xfb0] sm:$0xff]
  %v2378 = vld [vmem:[%s2 + $0xfb8] sm:$0xff]
  %v2379 = vld [vmem:[%s2 + $0xfc0] sm:$0xff]
  %v2380 = vld [vmem:[%s2 + $0xfc8] sm:$0xff]
  %v2381 = vld [vmem:[%s2 + $0xfd0] sm:$0xff]
  %v2382 = vld [vmem:[%s2 + $0xfd8] sm:$0xff]
  %v2383 = vld [vmem:[%s2 + $0xfe0] sm:$0xff]
  %v2384 = vld [vmem:[%s2 + $0xfe8] sm:$0xff]
  %v2385 = vld [vmem:[%s2 + $0xff0] sm:$0xff]
  %v2386 = vld [vmem:[%s2 + $0xff8] sm:$0xff]
  %2387 = vmatpush.msra.mxu0 %v1995
  %2388 = vmatpush.msra.mxu0 %v1987
  %2389 = vmatpush.msra.mxu0 %v1979
  %2390 = vmatpush.msra.mxu0 %v1971
  %2391 = vmatpush.msra.mxu0 %v1963
  %2392 = vmatpush.msra.mxu0 %v1955
  %2393 = vmatpush.msra.mxu0 %v1947
  %2394 = vmatpush.msra.mxu0 %v1939
  %2395 = vmatpush.msra.mxu0 %v1931
  %2396 = vmatpush.msra.mxu0 %v1923
  %2397 = vmatpush.msra.mxu0 %v1915
  %2398 = vmatpush.msra.mxu0 %v1907
  %2399 = vmatpush.msra.mxu0 %v1899
  %2400 = vmatpush.msra.mxu0 %v1891
  %2401 = vmatpush.msra.mxu0 %v1883
  %2402 = vmatpush.msra.mxu0 %v1875
  %2403 = vmatmul.f32.gmra.mxu0 %v1862
  %v2404 = vpop.f32.mrf.mxu0
  %v2405 = vadd.f32 0.0, %v2404
  %2406 = vdwg.mxu0
  %2407 = vmatpush.msra.mxu0 %v2123
  %2408 = vmatpush.msra.mxu0 %v2115
  %2409 = vmatpush.msra.mxu0 %v2107
  %2410 = vmatpush.msra.mxu0 %v2099
  %2411 = vmatpush.msra.mxu0 %v2091
  %2412 = vmatpush.msra.mxu0 %v2083
  %2413 = vmatpush.msra.mxu0 %v2075
  %2414 = vmatpush.msra.mxu0 %v2067
  %2415 = vmatpush.msra.mxu0 %v2059
  %2416 = vmatpush.msra.mxu0 %v2051
  %2417 = vmatpush.msra.mxu0 %v2043
  %2418 = vmatpush.msra.mxu0 %v2035
  %2419 = vmatpush.msra.mxu0 %v2027
  %2420 = vmatpush.msra.mxu0 %v2019
  %2421 = vmatpush.msra.mxu0 %v2011
  %2422 = vmatpush.msra.mxu0 %v2003
  %2423 = vmatmul.f32.gmra.mxu0 %v1863
  %v2424 = vpop.f32.mrf.mxu0
  %v2425 = vadd.f32 %v2405, %v2424
  %2426 = vdwg.mxu0
  %2427 = vmatpush.msra.mxu0 %v2251
  %2428 = vmatpush.msra.mxu0 %v2243
  %2429 = vmatpush.msra.mxu0 %v2235
  %2430 = vmatpush.msra.mxu0 %v2227
  %2431 = vmatpush.msra.mxu0 %v2219
  %2432 = vmatpush.msra.mxu0 %v2211
  %2433 = vmatpush.msra.mxu0 %v2203
  %2434 = vmatpush.msra.mxu0 %v2195
  %2435 = vmatpush.msra.mxu0 %v2187
  %2436 = vmatpush.msra.mxu0 %v2179
  %2437 = vmatpush.msra.mxu0 %v2171
  %2438 = vmatpush.msra.mxu0 %v2163
  %2439 = vmatpush.msra.mxu0 %v2155
  %2440 = vmatpush.msra.mxu0 %v2147
  %2441 = vmatpush.msra.mxu0 %v2139
  %2442 = vmatpush.msra.mxu0 %v2131
  %2443 = vmatmul.f32.gmra.mxu0 %v1864
  %v2444 = vpop.f32.mrf.mxu0
  %v2445 = vadd.f32 %v2425, %v2444
  %2446 = vdwg.mxu0
  %2447 = vmatpush.msra.mxu0 %v2379
  %2448 = vmatpush.msra.mxu0 %v2371
  %2449 = vmatpush.msra.mxu0 %v2363
  %2450 = vmatpush.msra.mxu0 %v2355
  %2451 = vmatpush.msra.mxu0 %v2347
  %2452 = vmatpush.msra.mxu0 %v2339
  %2453 = vmatpush.msra.mxu0 %v2331
  %2454 = vmatpush.msra.mxu0 %v2323
  %2455 = vmatpush.msra.mxu0 %v2315
  %2456 = vmatpush.msra.mxu0 %v2307
  %2457 = vmatpush.msra.mxu0 %v2299
  %2458 = vmatpush.msra.mxu0 %v2291
  %2459 = vmatpush.msra.mxu0 %v2283
  %2460 = vmatpush.msra.mxu0 %v2275
  %2461 = vmatpush.msra.mxu0 %v2267
  %2462 = vmatpush.msra.mxu0 %v2259
  %2463 = vmatmul.f32.gmra.mxu0 %v1865
  %v2464 = vpop.f32.mrf.mxu0
  %v2465 = vadd.f32 %v2445, %v2464
  %2466 = vdwg.mxu0
  %2467 = vmatpush.msra.mxu0 %v1996
  %2468 = vmatpush.msra.mxu0 %v1988
  %2469 = vmatpush.msra.mxu0 %v1980
  %2470 = vmatpush.msra.mxu0 %v1972
  %2471 = vmatpush.msra.mxu0 %v1964
  %2472 = vmatpush.msra.mxu0 %v1956
  %2473 = vmatpush.msra.mxu0 %v1948
  %2474 = vmatpush.msra.mxu0 %v1940
  %2475 = vmatpush.msra.mxu0 %v1932
  %2476 = vmatpush.msra.mxu0 %v1924
  %2477 = vmatpush.msra.mxu0 %v1916
  %2478 = vmatpush.msra.mxu0 %v1908
  %2479 = vmatpush.msra.mxu0 %v1900
  %2480 = vmatpush.msra.mxu0 %v1892
  %2481 = vmatpush.msra.mxu0 %v1884
  %2482 = vmatpush.msra.mxu0 %v1876
  %2483 = vmatmul.f32.gmra.mxu0 %v1862
  %v2484 = vpop.f32.mrf.mxu0
  %v2485 = vadd.f32 0.0, %v2484
  %2486 = vdwg.mxu0
  %2487 = vmatpush.msra.mxu0 %v2124
  %2488 = vmatpush.msra.mxu0 %v2116
  %2489 = vmatpush.msra.mxu0 %v2108
  %2490 = vmatpush.msra.mxu0 %v2100
  %2491 = vmatpush.msra.mxu0 %v2092
  %2492 = vmatpush.msra.mxu0 %v2084
  %2493 = vmatpush.msra.mxu0 %v2076
  %2494 = vmatpush.msra.mxu0 %v2068
  %2495 = vmatpush.msra.mxu0 %v2060
  %2496 = vmatpush.msra.mxu0 %v2052
  %2497 = vmatpush.msra.mxu0 %v2044
  %2498 = vmatpush.msra.mxu0 %v2036
  %2499 = vmatpush.msra.mxu0 %v2028
  %2500 = vmatpush.msra.mxu0 %v2020
  %2501 = vmatpush.msra.mxu0 %v2012
  %2502 = vmatpush.msra.mxu0 %v2004
  %2503 = vmatmul.f32.gmra.mxu0 %v1863
  %v2504 = vpop.f32.mrf.mxu0
  %v2505 = vadd.f32 %v2485, %v2504
  %2506 = vdwg.mxu0
  %2507 = vmatpush.msra.mxu0 %v2252
  %2508 = vmatpush.msra.mxu0 %v2244
  %2509 = vmatpush.msra.mxu0 %v2236
  %2510 = vmatpush.msra.mxu0 %v2228
  %2511 = vmatpush.msra.mxu0 %v2220
  %2512 = vmatpush.msra.mxu0 %v2212
  %2513 = vmatpush.msra.mxu0 %v2204
  %2514 = vmatpush.msra.mxu0 %v2196
  %2515 = vmatpush.msra.mxu0 %v2188
  %2516 = vmatpush.msra.mxu0 %v2180
  %2517 = vmatpush.msra.mxu0 %v2172
  %2518 = vmatpush.msra.mxu0 %v2164
  %2519 = vmatpush.msra.mxu0 %v2156
  %2520 = vmatpush.msra.mxu0 %v2148
  %2521 = vmatpush.msra.mxu0 %v2140
  %2522 = vmatpush.msra.mxu0 %v2132
  %2523 = vmatmul.f32.gmra.mxu0 %v1864
  %v2524 = vpop.f32.mrf.mxu0
  %v2525 = vadd.f32 %v2505, %v2524
  %2526 = vdwg.mxu0
  %2527 = vmatpush.msra.mxu0 %v2380
  %2528 = vmatpush.msra.mxu0 %v2372
  %2529 = vmatpush.msra.mxu0 %v2364
  %2530 = vmatpush.msra.mxu0 %v2356
  %2531 = vmatpush.msra.mxu0 %v2348
  %2532 = vmatpush.msra.mxu0 %v2340
  %2533 = vmatpush.msra.mxu0 %v2332
  %2534 = vmatpush.msra.mxu0 %v2324
  %2535 = vmatpush.msra.mxu0 %v2316
  %2536 = vmatpush.msra.mxu0 %v2308
  %2537 = vmatpush.msra.mxu0 %v2300
  %2538 = vmatpush.msra.mxu0 %v2292
  %2539 = vmatpush.msra.mxu0 %v2284
  %2540 = vmatpush.msra.mxu0 %v2276
  %2541 = vmatpush.msra.mxu0 %v2268
  %2542 = vmatpush.msra.mxu0 %v2260
  %2543 = vmatmul.f32.gmra.mxu0 %v1865
  %v2544 = vpop.f32.mrf.mxu0
  %v2545 = vadd.f32 %v2525, %v2544
  %2546 = vdwg.mxu0
  %2547 = vmatpush.msra.mxu0 %v1997
  %2548 = vmatpush.msra.mxu0 %v1989
  %2549 = vmatpush.msra.mxu0 %v1981
  %2550 = vmatpush.msra.mxu0 %v1973
  %2551 = vmatpush.msra.mxu0 %v1965
  %2552 = vmatpush.msra.mxu0 %v1957
  %2553 = vmatpush.msra.mxu0 %v1949
  %2554 = vmatpush.msra.mxu0 %v1941
  %2555 = vmatpush.msra.mxu0 %v1933
  %2556 = vmatpush.msra.mxu0 %v1925
  %2557 = vmatpush.msra.mxu0 %v1917
  %2558 = vmatpush.msra.mxu0 %v1909
  %2559 = vmatpush.msra.mxu0 %v1901
  %2560 = vmatpush.msra.mxu0 %v1893
  %2561 = vmatpush.msra.mxu0 %v1885
  %2562 = vmatpush.msra.mxu0 %v1877
  %2563 = vmatmul.f32.gmra.mxu0 %v1862
  %v2564 = vpop.f32.mrf.mxu0
  %v2565 = vadd.f32 0.0, %v2564
  %2566 = vdwg.mxu0
  %2567 = vmatpush.msra.mxu0 %v2125
  %2568 = vmatpush.msra.mxu0 %v2117
  %2569 = vmatpush.msra.mxu0 %v2109
  %2570 = vmatpush.msra.mxu0 %v2101
  %2571 = vmatpush.msra.mxu0 %v2093
  %2572 = vmatpush.msra.mxu0 %v2085
  %2573 = vmatpush.msra.mxu0 %v2077
  %2574 = vmatpush.msra.mxu0 %v2069
  %2575 = vmatpush.msra.mxu0 %v2061
  %2576 = vmatpush.msra.mxu0 %v2053
  %2577 = vmatpush.msra.mxu0 %v2045
  %2578 = vmatpush.msra.mxu0 %v2037
  %2579 = vmatpush.msra.mxu0 %v2029
  %2580 = vmatpush.msra.mxu0 %v2021
  %2581 = vmatpush.msra.mxu0 %v2013
  %2582 = vmatpush.msra.mxu0 %v2005
  %2583 = vmatmul.f32.gmra.mxu0 %v1863
  %v2584 = vpop.f32.mrf.mxu0
  %v2585 = vadd.f32 %v2565, %v2584
  %2586 = vdwg.mxu0
  %2587 = vmatpush.msra.mxu0 %v2253
  %2588 = vmatpush.msra.mxu0 %v2245
  %2589 = vmatpush.msra.mxu0 %v2237
  %2590 = vmatpush.msra.mxu0 %v2229
  %2591 = vmatpush.msra.mxu0 %v2221
  %2592 = vmatpush.msra.mxu0 %v2213
  %2593 = vmatpush.msra.mxu0 %v2205
  %2594 = vmatpush.msra.mxu0 %v2197
  %2595 = vmatpush.msra.mxu0 %v2189
  %2596 = vmatpush.msra.mxu0 %v2181
  %2597 = vmatpush.msra.mxu0 %v2173
  %2598 = vmatpush.msra.mxu0 %v2165
  %2599 = vmatpush.msra.mxu0 %v2157
  %2600 = vmatpush.msra.mxu0 %v2149
  %2601 = vmatpush.msra.mxu0 %v2141
  %2602 = vmatpush.msra.mxu0 %v2133
  %2603 = vmatmul.f32.gmra.mxu0 %v1864
  %v2604 = vpop.f32.mrf.mxu0
  %v2605 = vadd.f32 %v2585, %v2604
  %2606 = vdwg.mxu0
  %2607 = vmatpush.msra.mxu0 %v2381
  %2608 = vmatpush.msra.mxu0 %v2373
  %2609 = vmatpush.msra.mxu0 %v2365
  %2610 = vmatpush.msra.mxu0 %v2357
  %2611 = vmatpush.msra.mxu0 %v2349
  %2612 = vmatpush.msra.mxu0 %v2341
  %2613 = vmatpush.msra.mxu0 %v2333
  %2614 = vmatpush.msra.mxu0 %v2325
  %2615 = vmatpush.msra.mxu0 %v2317
  %2616 = vmatpush.msra.mxu0 %v2309
  %2617 = vmatpush.msra.mxu0 %v2301
  %2618 = vmatpush.msra.mxu0 %v2293
  %2619 = vmatpush.msra.mxu0 %v2285
  %2620 = vmatpush.msra.mxu0 %v2277
  %2621 = vmatpush.msra.mxu0 %v2269
  %2622 = vmatpush.msra.mxu0 %v2261
  %2623 = vmatmul.f32.gmra.mxu0 %v1865
  %v2624 = vpop.f32.mrf.mxu0
  %v2625 = vadd.f32 %v2605, %v2624
  %2626 = vdwg.mxu0
  %2627 = vmatpush.msra.mxu0 %v1998
  %2628 = vmatpush.msra.mxu0 %v1990
  %2629 = vmatpush.msra.mxu0 %v1982
  %2630 = vmatpush.msra.mxu0 %v1974
  %2631 = vmatpush.msra.mxu0 %v1966
  %2632 = vmatpush.msra.mxu0 %v1958
  %2633 = vmatpush.msra.mxu0 %v1950
  %2634 = vmatpush.msra.mxu0 %v1942
  %2635 = vmatpush.msra.mxu0 %v1934
  %2636 = vmatpush.msra.mxu0 %v1926
  %2637 = vmatpush.msra.mxu0 %v1918
  %2638 = vmatpush.msra.mxu0 %v1910
  %2639 = vmatpush.msra.mxu0 %v1902
  %2640 = vmatpush.msra.mxu0 %v1894
  %2641 = vmatpush.msra.mxu0 %v1886
  %2642 = vmatpush.msra.mxu0 %v1878
  %2643 = vmatmul.f32.gmra.mxu0 %v1862
  %v2644 = vpop.f32.mrf.mxu0
  %v2645 = vadd.f32 0.0, %v2644
  %2646 = vdwg.mxu0
  %2647 = vmatpush.msra.mxu0 %v2126
  %2648 = vmatpush.msra.mxu0 %v2118
  %2649 = vmatpush.msra.mxu0 %v2110
  %2650 = vmatpush.msra.mxu0 %v2102
  %2651 = vmatpush.msra.mxu0 %v2094
  %2652 = vmatpush.msra.mxu0 %v2086
  %2653 = vmatpush.msra.mxu0 %v2078
  %2654 = vmatpush.msra.mxu0 %v2070
  %2655 = vmatpush.msra.mxu0 %v2062
  %2656 = vmatpush.msra.mxu0 %v2054
  %2657 = vmatpush.msra.mxu0 %v2046
  %2658 = vmatpush.msra.mxu0 %v2038
  %2659 = vmatpush.msra.mxu0 %v2030
  %2660 = vmatpush.msra.mxu0 %v2022
  %2661 = vmatpush.msra.mxu0 %v2014
  %2662 = vmatpush.msra.mxu0 %v2006
  %2663 = vmatmul.f32.gmra.mxu0 %v1863
  %v2664 = vpop.f32.mrf.mxu0
  %v2665 = vadd.f32 %v2645, %v2664
  %2666 = vdwg.mxu0
  %2667 = vmatpush.msra.mxu0 %v2254
  %2668 = vmatpush.msra.mxu0 %v2246
  %2669 = vmatpush.msra.mxu0 %v2238
  %2670 = vmatpush.msra.mxu0 %v2230
  %2671 = vmatpush.msra.mxu0 %v2222
  %2672 = vmatpush.msra.mxu0 %v2214
  %2673 = vmatpush.msra.mxu0 %v2206
  %2674 = vmatpush.msra.mxu0 %v2198
  %2675 = vmatpush.msra.mxu0 %v2190
  %2676 = vmatpush.msra.mxu0 %v2182
  %2677 = vmatpush.msra.mxu0 %v2174
  %2678 = vmatpush.msra.mxu0 %v2166
  %2679 = vmatpush.msra.mxu0 %v2158
  %2680 = vmatpush.msra.mxu0 %v2150
  %2681 = vmatpush.msra.mxu0 %v2142
  %2682 = vmatpush.msra.mxu0 %v2134
  %2683 = vmatmul.f32.gmra.mxu0 %v1864
  %v2684 = vpop.f32.mrf.mxu0
  %v2685 = vadd.f32 %v2665, %v2684
  %2686 = vdwg.mxu0
  %2687 = vmatpush.msra.mxu0 %v2382
  %2688 = vmatpush.msra.mxu0 %v2374
  %2689 = vmatpush.msra.mxu0 %v2366
  %2690 = vmatpush.msra.mxu0 %v2358
  %2691 = vmatpush.msra.mxu0 %v2350
  %2692 = vmatpush.msra.mxu0 %v2342
  %2693 = vmatpush.msra.mxu0 %v2334
  %2694 = vmatpush.msra.mxu0 %v2326
  %2695 = vmatpush.msra.mxu0 %v2318
  %2696 = vmatpush.msra.mxu0 %v2310
  %2697 = vmatpush.msra.mxu0 %v2302
  %2698 = vmatpush.msra.mxu0 %v2294
  %2699 = vmatpush.msra.mxu0 %v2286
  %2700 = vmatpush.msra.mxu0 %v2278
  %2701 = vmatpush.msra.mxu0 %v2270
  %2702 = vmatpush.msra.mxu0 %v2262
  %2703 = vmatmul.f32.gmra.mxu0 %v1865
  %v2704 = vpop.f32.mrf.mxu0
  %v2705 = vadd.f32 %v2685, %v2704
  %2706 = vdwg.mxu0
  %2707 = vmatpush.msra.mxu0 %v1999
  %2708 = vmatpush.msra.mxu0 %v1991
  %2709 = vmatpush.msra.mxu0 %v1983
  %2710 = vmatpush.msra.mxu0 %v1975
  %2711 = vmatpush.msra.mxu0 %v1967
  %2712 = vmatpush.msra.mxu0 %v1959
  %2713 = vmatpush.msra.mxu0 %v1951
  %2714 = vmatpush.msra.mxu0 %v1943
  %2715 = vmatpush.msra.mxu0 %v1935
  %2716 = vmatpush.msra.mxu0 %v1927
  %2717 = vmatpush.msra.mxu0 %v1919
  %2718 = vmatpush.msra.mxu0 %v1911
  %2719 = vmatpush.msra.mxu0 %v1903
  %2720 = vmatpush.msra.mxu0 %v1895
  %2721 = vmatpush.msra.mxu0 %v1887
  %2722 = vmatpush.msra.mxu0 %v1879
  %2723 = vmatmul.f32.gmra.mxu0 %v1862
  %v2724 = vpop.f32.mrf.mxu0
  %v2725 = vadd.f32 0.0, %v2724
  %2726 = vdwg.mxu0
  %2727 = vmatpush.msra.mxu0 %v2127
  %2728 = vmatpush.msra.mxu0 %v2119
  %2729 = vmatpush.msra.mxu0 %v2111
  %2730 = vmatpush.msra.mxu0 %v2103
  %2731 = vmatpush.msra.mxu0 %v2095
  %2732 = vmatpush.msra.mxu0 %v2087
  %2733 = vmatpush.msra.mxu0 %v2079
  %2734 = vmatpush.msra.mxu0 %v2071
  %2735 = vmatpush.msra.mxu0 %v2063
  %2736 = vmatpush.msra.mxu0 %v2055
  %2737 = vmatpush.msra.mxu0 %v2047
  %2738 = vmatpush.msra.mxu0 %v2039
  %2739 = vmatpush.msra.mxu0 %v2031
  %2740 = vmatpush.msra.mxu0 %v2023
  %2741 = vmatpush.msra.mxu0 %v2015
  %2742 = vmatpush.msra.mxu0 %v2007
  %2743 = vmatmul.f32.gmra.mxu0 %v1863
  %v2744 = vpop.f32.mrf.mxu0
  %v2745 = vadd.f32 %v2725, %v2744
  %2746 = vdwg.mxu0
  %2747 = vmatpush.msra.mxu0 %v2255
  %2748 = vmatpush.msra.mxu0 %v2247
  %2749 = vmatpush.msra.mxu0 %v2239
  %2750 = vmatpush.msra.mxu0 %v2231
  %2751 = vmatpush.msra.mxu0 %v2223
  %2752 = vmatpush.msra.mxu0 %v2215
  %2753 = vmatpush.msra.mxu0 %v2207
  %2754 = vmatpush.msra.mxu0 %v2199
  %2755 = vmatpush.msra.mxu0 %v2191
  %2756 = vmatpush.msra.mxu0 %v2183
  %2757 = vmatpush.msra.mxu0 %v2175
  %2758 = vmatpush.msra.mxu0 %v2167
  %2759 = vmatpush.msra.mxu0 %v2159
  %2760 = vmatpush.msra.mxu0 %v2151
  %2761 = vmatpush.msra.mxu0 %v2143
  %2762 = vmatpush.msra.mxu0 %v2135
  %2763 = vmatmul.f32.gmra.mxu0 %v1864
  %v2764 = vpop.f32.mrf.mxu0
  %v2765 = vadd.f32 %v2745, %v2764
  %2766 = vdwg.mxu0
  %2767 = vmatpush.msra.mxu0 %v2383
  %2768 = vmatpush.msra.mxu0 %v2375
  %2769 = vmatpush.msra.mxu0 %v2367
  %2770 = vmatpush.msra.mxu0 %v2359
  %2771 = vmatpush.msra.mxu0 %v2351
  %2772 = vmatpush.msra.mxu0 %v2343
  %2773 = vmatpush.msra.mxu0 %v2335
  %2774 = vmatpush.msra.mxu0 %v2327
  %2775 = vmatpush.msra.mxu0 %v2319
  %2776 = vmatpush.msra.mxu0 %v2311
  %2777 = vmatpush.msra.mxu0 %v2303
  %2778 = vmatpush.msra.mxu0 %v2295
  %2779 = vmatpush.msra.mxu0 %v2287
  %2780 = vmatpush.msra.mxu0 %v2279
  %2781 = vmatpush.msra.mxu0 %v2271
  %2782 = vmatpush.msra.mxu0 %v2263
  %2783 = vmatmul.f32.gmra.mxu0 %v1865
  %v2784 = vpop.f32.mrf.mxu0
  %v2785 = vadd.f32 %v2765, %v2784
  %2786 = vdwg.mxu0
  %2787 = vmatpush.msra.mxu0 %v2000
  %2788 = vmatpush.msra.mxu0 %v1992
  %2789 = vmatpush.msra.mxu0 %v1984
  %2790 = vmatpush.msra.mxu0 %v1976
  %2791 = vmatpush.msra.mxu0 %v1968
  %2792 = vmatpush.msra.mxu0 %v1960
  %2793 = vmatpush.msra.mxu0 %v1952
  %2794 = vmatpush.msra.mxu0 %v1944
  %2795 = vmatpush.msra.mxu0 %v1936
  %2796 = vmatpush.msra.mxu0 %v1928
  %2797 = vmatpush.msra.mxu0 %v1920
  %2798 = vmatpush.msra.mxu0 %v1912
  %2799 = vmatpush.msra.mxu0 %v1904
  %2800 = vmatpush.msra.mxu0 %v1896
  %2801 = vmatpush.msra.mxu0 %v1888
  %2802 = vmatpush.msra.mxu0 %v1880
  %2803 = vmatmul.f32.gmra.mxu0 %v1862
  %v2804 = vpop.f32.mrf.mxu0
  %v2805 = vadd.f32 0.0, %v2804
  %2806 = vdwg.mxu0
  %2807 = vmatpush.msra.mxu0 %v2128
  %2808 = vmatpush.msra.mxu0 %v2120
  %2809 = vmatpush.msra.mxu0 %v2112
  %2810 = vmatpush.msra.mxu0 %v2104
  %2811 = vmatpush.msra.mxu0 %v2096
  %2812 = vmatpush.msra.mxu0 %v2088
  %2813 = vmatpush.msra.mxu0 %v2080
  %2814 = vmatpush.msra.mxu0 %v2072
  %2815 = vmatpush.msra.mxu0 %v2064
  %2816 = vmatpush.msra.mxu0 %v2056
  %2817 = vmatpush.msra.mxu0 %v2048
  %2818 = vmatpush.msra.mxu0 %v2040
  %2819 = vmatpush.msra.mxu0 %v2032
  %2820 = vmatpush.msra.mxu0 %v2024
  %2821 = vmatpush.msra.mxu0 %v2016
  %2822 = vmatpush.msra.mxu0 %v2008
  %2823 = vmatmul.f32.gmra.mxu0 %v1863
  %v2824 = vpop.f32.mrf.mxu0
  %v2825 = vadd.f32 %v2805, %v2824
  %2826 = vdwg.mxu0
  %2827 = vmatpush.msra.mxu0 %v2256
  %2828 = vmatpush.msra.mxu0 %v2248
  %2829 = vmatpush.msra.mxu0 %v2240
  %2830 = vmatpush.msra.mxu0 %v2232
  %2831 = vmatpush.msra.mxu0 %v2224
  %2832 = vmatpush.msra.mxu0 %v2216
  %2833 = vmatpush.msra.mxu0 %v2208
  %2834 = vmatpush.msra.mxu0 %v2200
  %2835 = vmatpush.msra.mxu0 %v2192
  %2836 = vmatpush.msra.mxu0 %v2184
  %2837 = vmatpush.msra.mxu0 %v2176
  %2838 = vmatpush.msra.mxu0 %v2168
  %2839 = vmatpush.msra.mxu0 %v2160
  %2840 = vmatpush.msra.mxu0 %v2152
  %2841 = vmatpush.msra.mxu0 %v2144
  %2842 = vmatpush.msra.mxu0 %v2136
  %2843 = vmatmul.f32.gmra.mxu0 %v1864
  %v2844 = vpop.f32.mrf.mxu0
  %v2845 = vadd.f32 %v2825, %v2844
  %2846 = vdwg.mxu0
  %2847 = vmatpush.msra.mxu0 %v2384
  %2848 = vmatpush.msra.mxu0 %v2376
  %2849 = vmatpush.msra.mxu0 %v2368
  %2850 = vmatpush.msra.mxu0 %v2360
  %2851 = vmatpush.msra.mxu0 %v2352
  %2852 = vmatpush.msra.mxu0 %v2344
  %2853 = vmatpush.msra.mxu0 %v2336
  %2854 = vmatpush.msra.mxu0 %v2328
  %2855 = vmatpush.msra.mxu0 %v2320
  %2856 = vmatpush.msra.mxu0 %v2312
  %2857 = vmatpush.msra.mxu0 %v2304
  %2858 = vmatpush.msra.mxu0 %v2296
  %2859 = vmatpush.msra.mxu0 %v2288
  %2860 = vmatpush.msra.mxu0 %v2280
  %2861 = vmatpush.msra.mxu0 %v2272
  %2862 = vmatpush.msra.mxu0 %v2264
  %2863 = vmatmul.f32.gmra.mxu0 %v1865
  %v2864 = vpop.f32.mrf.mxu0
  %v2865 = vadd.f32 %v2845, %v2864
  %2866 = vdwg.mxu0
  %2867 = vmatpush.msra.mxu0 %v2001
  %2868 = vmatpush.msra.mxu0 %v1993
  %2869 = vmatpush.msra.mxu0 %v1985
  %2870 = vmatpush.msra.mxu0 %v1977
  %2871 = vmatpush.msra.mxu0 %v1969
  %2872 = vmatpush.msra.mxu0 %v1961
  %2873 = vmatpush.msra.mxu0 %v1953
  %2874 = vmatpush.msra.mxu0 %v1945
  %2875 = vmatpush.msra.mxu0 %v1937
  %2876 = vmatpush.msra.mxu0 %v1929
  %2877 = vmatpush.msra.mxu0 %v1921
  %2878 = vmatpush.msra.mxu0 %v1913
  %2879 = vmatpush.msra.mxu0 %v1905
  %2880 = vmatpush.msra.mxu0 %v1897
  %2881 = vmatpush.msra.mxu0 %v1889
  %2882 = vmatpush.msra.mxu0 %v1881
  %2883 = vmatmul.f32.gmra.mxu0 %v1862
  %v2884 = vpop.f32.mrf.mxu0
  %v2885 = vadd.f32 0.0, %v2884
  %2886 = vdwg.mxu0
  %2887 = vmatpush.msra.mxu0 %v2129
  %2888 = vmatpush.msra.mxu0 %v2121
  %2889 = vmatpush.msra.mxu0 %v2113
  %2890 = vmatpush.msra.mxu0 %v2105
  %2891 = vmatpush.msra.mxu0 %v2097
  %2892 = vmatpush.msra.mxu0 %v2089
  %2893 = vmatpush.msra.mxu0 %v2081
  %2894 = vmatpush.msra.mxu0 %v2073
  %2895 = vmatpush.msra.mxu0 %v2065
  %2896 = vmatpush.msra.mxu0 %v2057
  %2897 = vmatpush.msra.mxu0 %v2049
  %2898 = vmatpush.msra.mxu0 %v2041
  %2899 = vmatpush.msra.mxu0 %v2033
  %2900 = vmatpush.msra.mxu0 %v2025
  %2901 = vmatpush.msra.mxu0 %v2017
  %2902 = vmatpush.msra.mxu0 %v2009
  %2903 = vmatmul.f32.gmra.mxu0 %v1863
  %v2904 = vpop.f32.mrf.mxu0
  %v2905 = vadd.f32 %v2885, %v2904
  %2906 = vdwg.mxu0
  %2907 = vmatpush.msra.mxu0 %v2257
  %2908 = vmatpush.msra.mxu0 %v2249
  %2909 = vmatpush.msra.mxu0 %v2241
  %2910 = vmatpush.msra.mxu0 %v2233
  %2911 = vmatpush.msra.mxu0 %v2225
  %2912 = vmatpush.msra.mxu0 %v2217
  %2913 = vmatpush.msra.mxu0 %v2209
  %2914 = vmatpush.msra.mxu0 %v2201
  %2915 = vmatpush.msra.mxu0 %v2193
  %2916 = vmatpush.msra.mxu0 %v2185
  %2917 = vmatpush.msra.mxu0 %v2177
  %2918 = vmatpush.msra.mxu0 %v2169
  %2919 = vmatpush.msra.mxu0 %v2161
  %2920 = vmatpush.msra.mxu0 %v2153
  %2921 = vmatpush.msra.mxu0 %v2145
  %2922 = vmatpush.msra.mxu0 %v2137
  %2923 = vmatmul.f32.gmra.mxu0 %v1864
  %v2924 = vpop.f32.mrf.mxu0
  %v2925 = vadd.f32 %v2905, %v2924
  %2926 = vdwg.mxu0
  %2927 = vmatpush.msra.mxu0 %v2385
  %2928 = vmatpush.msra.mxu0 %v2377
  %2929 = vmatpush.msra.mxu0 %v2369
  %2930 = vmatpush.msra.mxu0 %v2361
  %2931 = vmatpush.msra.mxu0 %v2353
  %2932 = vmatpush.msra.mxu0 %v2345
  %2933 = vmatpush.msra.mxu0 %v2337
  %2934 = vmatpush.msra.mxu0 %v2329
  %2935 = vmatpush.msra.mxu0 %v2321
  %2936 = vmatpush.msra.mxu0 %v2313
  %2937 = vmatpush.msra.mxu0 %v2305
  %2938 = vmatpush.msra.mxu0 %v2297
  %2939 = vmatpush.msra.mxu0 %v2289
  %2940 = vmatpush.msra.mxu0 %v2281
  %2941 = vmatpush.msra.mxu0 %v2273
  %2942 = vmatpush.msra.mxu0 %v2265
  %2943 = vmatmul.f32.gmra.mxu0 %v1865
  %v2944 = vpop.f32.mrf.mxu0
  %v2945 = vadd.f32 %v2925, %v2944
  %2946 = vdwg.mxu0
  %2947 = vmatpush.msra.mxu0 %v2002
  %2948 = vmatpush.msra.mxu0 %v1994
  %2949 = vmatpush.msra.mxu0 %v1986
  %2950 = vmatpush.msra.mxu0 %v1978
  %2951 = vmatpush.msra.mxu0 %v1970
  %2952 = vmatpush.msra.mxu0 %v1962
  %2953 = vmatpush.msra.mxu0 %v1954
  %2954 = vmatpush.msra.mxu0 %v1946
  %2955 = vmatpush.msra.mxu0 %v1938
  %2956 = vmatpush.msra.mxu0 %v1930
  %2957 = vmatpush.msra.mxu0 %v1922
  %2958 = vmatpush.msra.mxu0 %v1914
  %2959 = vmatpush.msra.mxu0 %v1906
  %2960 = vmatpush.msra.mxu0 %v1898
  %2961 = vmatpush.msra.mxu0 %v1890
  %2962 = vmatpush.msra.mxu0 %v1882
  %2963 = vmatmul.f32.gmra.mxu0 %v1862
  %v2964 = vpop.f32.mrf.mxu0
  %v2965 = vadd.f32 0.0, %v2964
  %2966 = vdwg.mxu0
  %2967 = vmatpush.msra.mxu0 %v2130
  %2968 = vmatpush.msra.mxu0 %v2122
  %2969 = vmatpush.msra.mxu0 %v2114
  %2970 = vmatpush.msra.mxu0 %v2106
  %2971 = vmatpush.msra.mxu0 %v2098
  %2972 = vmatpush.msra.mxu0 %v2090
  %2973 = vmatpush.msra.mxu0 %v2082
  %2974 = vmatpush.msra.mxu0 %v2074
  %2975 = vmatpush.msra.mxu0 %v2066
  %2976 = vmatpush.msra.mxu0 %v2058
  %2977 = vmatpush.msra.mxu0 %v2050
  %2978 = vmatpush.msra.mxu0 %v2042
  %2979 = vmatpush.msra.mxu0 %v2034
  %2980 = vmatpush.msra.mxu0 %v2026
  %2981 = vmatpush.msra.mxu0 %v2018
  %2982 = vmatpush.msra.mxu0 %v2010
  %2983 = vmatmul.f32.gmra.mxu0 %v1863
  %v2984 = vpop.f32.mrf.mxu0
  %v2985 = vadd.f32 %v2965, %v2984
  %2986 = vdwg.mxu0
  %2987 = vmatpush.msra.mxu0 %v2258
  %2988 = vmatpush.msra.mxu0 %v2250
  %2989 = vmatpush.msra.mxu0 %v2242
  %2990 = vmatpush.msra.mxu0 %v2234
  %2991 = vmatpush.msra.mxu0 %v2226
  %2992 = vmatpush.msra.mxu0 %v2218
  %2993 = vmatpush.msra.mxu0 %v2210
  %2994 = vmatpush.msra.mxu0 %v2202
  %2995 = vmatpush.msra.mxu0 %v2194
  %2996 = vmatpush.msra.mxu0 %v2186
  %2997 = vmatpush.msra.mxu0 %v2178
  %2998 = vmatpush.msra.mxu0 %v2170
  %2999 = vmatpush.msra.mxu0 %v2162
  %3000 = vmatpush.msra.mxu0 %v2154
  %3001 = vmatpush.msra.mxu0 %v2146
  %3002 = vmatpush.msra.mxu0 %v2138
  %3003 = vmatmul.f32.gmra.mxu0 %v1864
  %v3004 = vpop.f32.mrf.mxu0
  %v3005 = vadd.f32 %v2985, %v3004
  %3006 = vdwg.mxu0
  %3007 = vmatpush.msra.mxu0 %v2386
  %3008 = vmatpush.msra.mxu0 %v2378
  %3009 = vmatpush.msra.mxu0 %v2370
  %3010 = vmatpush.msra.mxu0 %v2362
  %3011 = vmatpush.msra.mxu0 %v2354
  %3012 = vmatpush.msra.mxu0 %v2346
  %3013 = vmatpush.msra.mxu0 %v2338
  %3014 = vmatpush.msra.mxu0 %v2330
  %3015 = vmatpush.msra.mxu0 %v2322
  %3016 = vmatpush.msra.mxu0 %v2314
  %3017 = vmatpush.msra.mxu0 %v2306
  %3018 = vmatpush.msra.mxu0 %v2298
  %3019 = vmatpush.msra.mxu0 %v2290
  %3020 = vmatpush.msra.mxu0 %v2282
  %3021 = vmatpush.msra.mxu0 %v2274
  %3022 = vmatpush.msra.mxu0 %v2266
  %3023 = vmatmul.f32.gmra.mxu0 %v1865
  %v3024 = vpop.f32.mrf.mxu0
  %v3025 = vadd.f32 %v3005, %v3024
  %3026 = vdwg.mxu0
  %v3027 = vadd.f32 %v1867, %v2465
  %v3028 = vadd.f32 %v1868, %v2545
  %v3029 = vadd.f32 %v1869, %v2625
  %v3030 = vadd.f32 %v1870, %v2705
  %v3031 = vadd.f32 %v1871, %v2785
  %v3032 = vadd.f32 %v1872, %v2865
  %v3033 = vadd.f32 %v1873, %v2945
  %v3034 = vadd.f32 %v1874, %v3025
  %v3035 = vxor.u32 %v3027, 2147483648
  %v3036 = vxor.u32 %v3028, 2147483648
  %v3037 = vxor.u32 %v3029, 2147483648
  %v3038 = vxor.u32 %v3030, 2147483648
  %v3039 = vxor.u32 %v3031, 2147483648
  %v3040 = vxor.u32 %v3032, 2147483648
  %v3041 = vmul.f32 %v3035, 1.442695
  %v3042 = vpow.pop %v3041
  %v3043 = vmul.f32 %v3036, 1.442695
  %v3044 = vpow.pop %v3043
  %v3045 = vmul.f32 %v3037, 1.442695
  %v3046 = vpow.pop %v3045
  %v3047 = vmul.f32 %v3038, 1.442695
  %v3048 = vpow.pop %v3047
  %v3049 = vmul.f32 %v3039, 1.442695
  %v3050 = vpow.pop %v3049
  %v3051 = vmul.f32 %v3040, 1.442695
  %v3052 = vpow.pop %v3051
  %v3053 = vadd.f32 %v3042, 1.0
  %v3054 = vadd.f32 %v3044, 1.0
  %v3055 = vadd.f32 %v3046, 1.0
  %v3056 = vadd.f32 %v3048, 1.0
  %v3057 = vadd.f32 %v3050, 1.0
  %v3058 = vadd.f32 %v3052, 1.0
  %v3059 = vrcp.pop %v3053
  %v3060 = vmul.f32 %v3053, %v3059
  %v3061 = vsub.f32 1.0, %v3060
  %v3062 = vmul.f32 %v3059, %v3061
  %v3063 = vadd.f32 %v3059, %v3062
  %vm3064 = vweird.f32 %v3053
  %vm3065 = vweird.f32 %v3059
  %vm3066 = vmor %vm3064, %vm3065
  %v3067 = vsel %vm3066, %v3059, %v3063
  %v3068 = vand.u32 2147483647, %v3053
  %vm3069 = vcmp.eq.f32.partialorder %v3068, 8.507059e+37
  %v3070 = vand.u32 %v3053, 2147483648
  %v3071 = vor.u32 1.1754944e-38, %v3070
  %v3072 = vsel %vm3069, %v3071, %v3067
  %v3073 = vmul.f32 1.0, %v3072
  %v3074 = vrcp.pop %v3054
  %v3075 = vmul.f32 %v3054, %v3074
  %v3076 = vsub.f32 1.0, %v3075
  %v3077 = vmul.f32 %v3074, %v3076
  %v3078 = vadd.f32 %v3074, %v3077
  %vm3079 = vweird.f32 %v3054
  %vm3080 = vweird.f32 %v3074
  %vm3081 = vmor %vm3079, %vm3080
  %v3082 = vsel %vm3081, %v3074, %v3078
  %v3083 = vand.u32 2147483647, %v3054
  %vm3084 = vcmp.eq.f32.partialorder %v3083, 8.507059e+37
  %v3085 = vand.u32 %v3054, 2147483648
  %v3086 = vor.u32 1.1754944e-38, %v3085
  %v3087 = vsel %vm3084, %v3086, %v3082
  %v3088 = vmul.f32 1.0, %v3087
  %v3089 = vrcp.pop %v3055
  %v3090 = vmul.f32 %v3055, %v3089
  %v3091 = vsub.f32 1.0, %v3090
  %v3092 = vmul.f32 %v3089, %v3091
  %v3093 = vadd.f32 %v3089, %v3092
  %vm3094 = vweird.f32 %v3055
  %vm3095 = vweird.f32 %v3089
  %vm3096 = vmor %vm3094, %vm3095
  %v3097 = vsel %vm3096, %v3089, %v3093
  %v3098 = vand.u32 2147483647, %v3055
  %vm3099 = vcmp.eq.f32.partialorder %v3098, 8.507059e+37
  %v3100 = vand.u32 %v3055, 2147483648
  %v3101 = vor.u32 1.1754944e-38, %v3100
  %v3102 = vsel %vm3099, %v3101, %v3097
  %v3103 = vmul.f32 1.0, %v3102
  %v3104 = vrcp.pop %v3056
  %v3105 = vmul.f32 %v3056, %v3104
  %v3106 = vsub.f32 1.0, %v3105
  %v3107 = vmul.f32 %v3104, %v3106
  %v3108 = vadd.f32 %v3104, %v3107
  %vm3109 = vweird.f32 %v3056
  %vm3110 = vweird.f32 %v3104
  %vm3111 = vmor %vm3109, %vm3110
  %v3112 = vsel %vm3111, %v3104, %v3108
  %v3113 = vand.u32 2147483647, %v3056
  %vm3114 = vcmp.eq.f32.partialorder %v3113, 8.507059e+37
  %v3115 = vand.u32 %v3056, 2147483648
  %v3116 = vor.u32 1.1754944e-38, %v3115
  %v3117 = vsel %vm3114, %v3116, %v3112
  %v3118 = vmul.f32 1.0, %v3117
  %v3119 = vrcp.pop %v3057
  %v3120 = vmul.f32 %v3057, %v3119
  %v3121 = vsub.f32 1.0, %v3120
  %v3122 = vmul.f32 %v3119, %v3121
  %v3123 = vadd.f32 %v3119, %v3122
  %vm3124 = vweird.f32 %v3057
  %vm3125 = vweird.f32 %v3119
  %vm3126 = vmor %vm3124, %vm3125
  %v3127 = vsel %vm3126, %v3119, %v3123
  %v3128 = vand.u32 2147483647, %v3057
  %vm3129 = vcmp.eq.f32.partialorder %v3128, 8.507059e+37
  %v3130 = vand.u32 %v3057, 2147483648
  %v3131 = vor.u32 1.1754944e-38, %v3130
  %v3132 = vsel %vm3129, %v3131, %v3127
  %v3133 = vmul.f32 1.0, %v3132
  %v3134 = vrcp.pop %v3058
  %v3135 = vmul.f32 %v3058, %v3134
  %v3136 = vsub.f32 1.0, %v3135
  %v3137 = vmul.f32 %v3134, %v3136
  %v3138 = vadd.f32 %v3134, %v3137
  %vm3139 = vweird.f32 %v3058
  %vm3140 = vweird.f32 %v3134
  %vm3141 = vmor %vm3139, %vm3140
  %v3142 = vsel %vm3141, %v3134, %v3138
  %v3143 = vand.u32 2147483647, %v3058
  %vm3144 = vcmp.eq.f32.partialorder %v3143, 8.507059e+37
  %v3145 = vand.u32 %v3058, 2147483648
  %v3146 = vor.u32 1.1754944e-38, %v3145
  %v3147 = vsel %vm3144, %v3146, %v3142
  %v3148 = vmul.f32 1.0, %v3147
  %v3149 = vtanh.pop %v3033
  %v3150 = vtanh.pop %v3034
  %v3151 = vmul.f32 %v3103, %v1851
  %v3152 = vmul.f32 %v3118, %v1852
  %v3153 = vmul.f32 %v3073, %v3149
  %v3154 = vmul.f32 %v3088, %v3150
  %v3155 = vadd.f32 %v3151, %v3153
  %v3156 = vadd.f32 %v3152, %v3154
  %v3157 = vtanh.pop %v3155
  %v3158 = vtanh.pop %v3156
  %v3159 = vmul.f32 %v3133, %v3157
  %v3160 = vmul.f32 %v3148, %v3158
  %s3161 = scalar_lea.vmem [#allocation3], 16
  %3162 = vst [vmem:[%s3161] sm:$0xff] %v3159
  %3163 = vst [vmem:[%s3161 + $0x8] sm:$0xff] %v3160
  %s3164 = scalar_lea.vmem [#allocation4], 96
  %3165 = vst [vmem:[%s3164] sm:$0xff] %v3159
  %3166 = vst [vmem:[%s3164 + $0x8] sm:$0xff] %v3160
  %v3167 = vmul.f32 %v3159, %v555
  %v3168 = vmul.f32 %v3160, %v555
  %v3169 = vmul.f32 %v3159, %v560
  %v3170 = vmul.f32 %v3160, %v560
  %s3171 = scalar_lea.vmem [#allocation2], 128
  %v3172 = vld [vmem:[%s3171] sm:$0xff]
  %v3173 = vld [vmem:[%s3171 + $0x8] sm:$0xff]
  %v3174 = vld [vmem:[%s3171 + $0x10] sm:$0xff]
  %v3175 = vld [vmem:[%s3171 + $0x18] sm:$0xff]
  %v3176 = vld [vmem:[%s3171 + $0x20] sm:$0xff]
  %v3177 = vld [vmem:[%s3171 + $0x28] sm:$0xff]
  %v3178 = vld [vmem:[%s3171 + $0x30] sm:$0xff]
  %v3179 = vld [vmem:[%s3171 + $0x38] sm:$0xff]
  %v3180 = vld [vmem:[%s2] sm:$0xff]
  %v3181 = vld [vmem:[%s2 + $0x8] sm:$0xff]
  %v3182 = vld [vmem:[%s2 + $0x10] sm:$0xff]
  %v3183 = vld [vmem:[%s2 + $0x18] sm:$0xff]
  %v3184 = vld [vmem:[%s2 + $0x20] sm:$0xff]
  %v3185 = vld [vmem:[%s2 + $0x28] sm:$0xff]
  %v3186 = vld [vmem:[%s2 + $0x30] sm:$0xff]
  %v3187 = vld [vmem:[%s2 + $0x38] sm:$0xff]
  %v3188 = vld [vmem:[%s2 + $0x40] sm:$0xff]
  %v3189 = vld [vmem:[%s2 + $0x48] sm:$0xff]
  %v3190 = vld [vmem:[%s2 + $0x50] sm:$0xff]
  %v3191 = vld [vmem:[%s2 + $0x58] sm:$0xff]
  %v3192 = vld [vmem:[%s2 + $0x60] sm:$0xff]
  %v3193 = vld [vmem:[%s2 + $0x68] sm:$0xff]
  %v3194 = vld [vmem:[%s2 + $0x70] sm:$0xff]
  %v3195 = vld [vmem:[%s2 + $0x78] sm:$0xff]
  %v3196 = vld [vmem:[%s2 + $0x80] sm:$0xff]
  %v3197 = vld [vmem:[%s2 + $0x88] sm:$0xff]
  %v3198 = vld [vmem:[%s2 + $0x90] sm:$0xff]
  %v3199 = vld [vmem:[%s2 + $0x98] sm:$0xff]
  %v3200 = vld [vmem:[%s2 + $0xa0] sm:$0xff]
  %v3201 = vld [vmem:[%s2 + $0xa8] sm:$0xff]
  %v3202 = vld [vmem:[%s2 + $0xb0] sm:$0xff]
  %v3203 = vld [vmem:[%s2 + $0xb8] sm:$0xff]
  %v3204 = vld [vmem:[%s2 + $0xc0] sm:$0xff]
  %v3205 = vld [vmem:[%s2 + $0xc8] sm:$0xff]
  %v3206 = vld [vmem:[%s2 + $0xd0] sm:$0xff]
  %v3207 = vld [vmem:[%s2 + $0xd8] sm:$0xff]
  %v3208 = vld [vmem:[%s2 + $0xe0] sm:$0xff]
  %v3209 = vld [vmem:[%s2 + $0xe8] sm:$0xff]
  %v3210 = vld [vmem:[%s2 + $0xf0] sm:$0xff]
  %v3211 = vld [vmem:[%s2 + $0xf8] sm:$0xff]
  %v3212 = vld [vmem:[%s2 + $0x100] sm:$0xff]
  %v3213 = vld [vmem:[%s2 + $0x108] sm:$0xff]
  %v3214 = vld [vmem:[%s2 + $0x110] sm:$0xff]
  %v3215 = vld [vmem:[%s2 + $0x118] sm:$0xff]
  %v3216 = vld [vmem:[%s2 + $0x120] sm:$0xff]
  %v3217 = vld [vmem:[%s2 + $0x128] sm:$0xff]
  %v3218 = vld [vmem:[%s2 + $0x130] sm:$0xff]
  %v3219 = vld [vmem:[%s2 + $0x138] sm:$0xff]
  %v3220 = vld [vmem:[%s2 + $0x140] sm:$0xff]
  %v3221 = vld [vmem:[%s2 + $0x148] sm:$0xff]
  %v3222 = vld [vmem:[%s2 + $0x150] sm:$0xff]
  %v3223 = vld [vmem:[%s2 + $0x158] sm:$0xff]
  %v3224 = vld [vmem:[%s2 + $0x160] sm:$0xff]
  %v3225 = vld [vmem:[%s2 + $0x168] sm:$0xff]
  %v3226 = vld [vmem:[%s2 + $0x170] sm:$0xff]
  %v3227 = vld [vmem:[%s2 + $0x178] sm:$0xff]
  %v3228 = vld [vmem:[%s2 + $0x180] sm:$0xff]
  %v3229 = vld [vmem:[%s2 + $0x188] sm:$0xff]
  %v3230 = vld [vmem:[%s2 + $0x190] sm:$0xff]
  %v3231 = vld [vmem:[%s2 + $0x198] sm:$0xff]
  %v3232 = vld [vmem:[%s2 + $0x1a0] sm:$0xff]
  %v3233 = vld [vmem:[%s2 + $0x1a8] sm:$0xff]
  %v3234 = vld [vmem:[%s2 + $0x1b0] sm:$0xff]
  %v3235 = vld [vmem:[%s2 + $0x1b8] sm:$0xff]
  %v3236 = vld [vmem:[%s2 + $0x1c0] sm:$0xff]
  %v3237 = vld [vmem:[%s2 + $0x1c8] sm:$0xff]
  %v3238 = vld [vmem:[%s2 + $0x1d0] sm:$0xff]
  %v3239 = vld [vmem:[%s2 + $0x1d8] sm:$0xff]
  %v3240 = vld [vmem:[%s2 + $0x1e0] sm:$0xff]
  %v3241 = vld [vmem:[%s2 + $0x1e8] sm:$0xff]
  %v3242 = vld [vmem:[%s2 + $0x1f0] sm:$0xff]
  %v3243 = vld [vmem:[%s2 + $0x1f8] sm:$0xff]
  %v3244 = vld [vmem:[%s2 + $0x200] sm:$0xff]
  %v3245 = vld [vmem:[%s2 + $0x208] sm:$0xff]
  %v3246 = vld [vmem:[%s2 + $0x210] sm:$0xff]
  %v3247 = vld [vmem:[%s2 + $0x218] sm:$0xff]
  %v3248 = vld [vmem:[%s2 + $0x220] sm:$0xff]
  %v3249 = vld [vmem:[%s2 + $0x228] sm:$0xff]
  %v3250 = vld [vmem:[%s2 + $0x230] sm:$0xff]
  %v3251 = vld [vmem:[%s2 + $0x238] sm:$0xff]
  %v3252 = vld [vmem:[%s2 + $0x240] sm:$0xff]
  %v3253 = vld [vmem:[%s2 + $0x248] sm:$0xff]
  %v3254 = vld [vmem:[%s2 + $0x250] sm:$0xff]
  %v3255 = vld [vmem:[%s2 + $0x258] sm:$0xff]
  %v3256 = vld [vmem:[%s2 + $0x260] sm:$0xff]
  %v3257 = vld [vmem:[%s2 + $0x268] sm:$0xff]
  %v3258 = vld [vmem:[%s2 + $0x270] sm:$0xff]
  %v3259 = vld [vmem:[%s2 + $0x278] sm:$0xff]
  %v3260 = vld [vmem:[%s2 + $0x280] sm:$0xff]
  %v3261 = vld [vmem:[%s2 + $0x288] sm:$0xff]
  %v3262 = vld [vmem:[%s2 + $0x290] sm:$0xff]
  %v3263 = vld [vmem:[%s2 + $0x298] sm:$0xff]
  %v3264 = vld [vmem:[%s2 + $0x2a0] sm:$0xff]
  %v3265 = vld [vmem:[%s2 + $0x2a8] sm:$0xff]
  %v3266 = vld [vmem:[%s2 + $0x2b0] sm:$0xff]
  %v3267 = vld [vmem:[%s2 + $0x2b8] sm:$0xff]
  %v3268 = vld [vmem:[%s2 + $0x2c0] sm:$0xff]
  %v3269 = vld [vmem:[%s2 + $0x2c8] sm:$0xff]
  %v3270 = vld [vmem:[%s2 + $0x2d0] sm:$0xff]
  %v3271 = vld [vmem:[%s2 + $0x2d8] sm:$0xff]
  %v3272 = vld [vmem:[%s2 + $0x2e0] sm:$0xff]
  %v3273 = vld [vmem:[%s2 + $0x2e8] sm:$0xff]
  %v3274 = vld [vmem:[%s2 + $0x2f0] sm:$0xff]
  %v3275 = vld [vmem:[%s2 + $0x2f8] sm:$0xff]
  %v3276 = vld [vmem:[%s2 + $0x300] sm:$0xff]
  %v3277 = vld [vmem:[%s2 + $0x308] sm:$0xff]
  %v3278 = vld [vmem:[%s2 + $0x310] sm:$0xff]
  %v3279 = vld [vmem:[%s2 + $0x318] sm:$0xff]
  %v3280 = vld [vmem:[%s2 + $0x320] sm:$0xff]
  %v3281 = vld [vmem:[%s2 + $0x328] sm:$0xff]
  %v3282 = vld [vmem:[%s2 + $0x330] sm:$0xff]
  %v3283 = vld [vmem:[%s2 + $0x338] sm:$0xff]
  %v3284 = vld [vmem:[%s2 + $0x340] sm:$0xff]
  %v3285 = vld [vmem:[%s2 + $0x348] sm:$0xff]
  %v3286 = vld [vmem:[%s2 + $0x350] sm:$0xff]
  %v3287 = vld [vmem:[%s2 + $0x358] sm:$0xff]
  %v3288 = vld [vmem:[%s2 + $0x360] sm:$0xff]
  %v3289 = vld [vmem:[%s2 + $0x368] sm:$0xff]
  %v3290 = vld [vmem:[%s2 + $0x370] sm:$0xff]
  %v3291 = vld [vmem:[%s2 + $0x378] sm:$0xff]
  %v3292 = vld [vmem:[%s2 + $0x380] sm:$0xff]
  %v3293 = vld [vmem:[%s2 + $0x388] sm:$0xff]
  %v3294 = vld [vmem:[%s2 + $0x390] sm:$0xff]
  %v3295 = vld [vmem:[%s2 + $0x398] sm:$0xff]
  %v3296 = vld [vmem:[%s2 + $0x3a0] sm:$0xff]
  %v3297 = vld [vmem:[%s2 + $0x3a8] sm:$0xff]
  %v3298 = vld [vmem:[%s2 + $0x3b0] sm:$0xff]
  %v3299 = vld [vmem:[%s2 + $0x3b8] sm:$0xff]
  %v3300 = vld [vmem:[%s2 + $0x3c0] sm:$0xff]
  %v3301 = vld [vmem:[%s2 + $0x3c8] sm:$0xff]
  %v3302 = vld [vmem:[%s2 + $0x3d0] sm:$0xff]
  %v3303 = vld [vmem:[%s2 + $0x3d8] sm:$0xff]
  %v3304 = vld [vmem:[%s2 + $0x3e0] sm:$0xff]
  %v3305 = vld [vmem:[%s2 + $0x3e8] sm:$0xff]
  %v3306 = vld [vmem:[%s2 + $0x3f0] sm:$0xff]
  %v3307 = vld [vmem:[%s2 + $0x3f8] sm:$0xff]
  %v3308 = vld [vmem:[%s2 + $0x400] sm:$0xff]
  %v3309 = vld [vmem:[%s2 + $0x408] sm:$0xff]
  %v3310 = vld [vmem:[%s2 + $0x410] sm:$0xff]
  %v3311 = vld [vmem:[%s2 + $0x418] sm:$0xff]
  %v3312 = vld [vmem:[%s2 + $0x420] sm:$0xff]
  %v3313 = vld [vmem:[%s2 + $0x428] sm:$0xff]
  %v3314 = vld [vmem:[%s2 + $0x430] sm:$0xff]
  %v3315 = vld [vmem:[%s2 + $0x438] sm:$0xff]
  %v3316 = vld [vmem:[%s2 + $0x440] sm:$0xff]
  %v3317 = vld [vmem:[%s2 + $0x448] sm:$0xff]
  %v3318 = vld [vmem:[%s2 + $0x450] sm:$0xff]
  %v3319 = vld [vmem:[%s2 + $0x458] sm:$0xff]
  %v3320 = vld [vmem:[%s2 + $0x460] sm:$0xff]
  %v3321 = vld [vmem:[%s2 + $0x468] sm:$0xff]
  %v3322 = vld [vmem:[%s2 + $0x470] sm:$0xff]
  %v3323 = vld [vmem:[%s2 + $0x478] sm:$0xff]
  %v3324 = vld [vmem:[%s2 + $0x480] sm:$0xff]
  %v3325 = vld [vmem:[%s2 + $0x488] sm:$0xff]
  %v3326 = vld [vmem:[%s2 + $0x490] sm:$0xff]
  %v3327 = vld [vmem:[%s2 + $0x498] sm:$0xff]
  %v3328 = vld [vmem:[%s2 + $0x4a0] sm:$0xff]
  %v3329 = vld [vmem:[%s2 + $0x4a8] sm:$0xff]
  %v3330 = vld [vmem:[%s2 + $0x4b0] sm:$0xff]
  %v3331 = vld [vmem:[%s2 + $0x4b8] sm:$0xff]
  %v3332 = vld [vmem:[%s2 + $0x4c0] sm:$0xff]
  %v3333 = vld [vmem:[%s2 + $0x4c8] sm:$0xff]
  %v3334 = vld [vmem:[%s2 + $0x4d0] sm:$0xff]
  %v3335 = vld [vmem:[%s2 + $0x4d8] sm:$0xff]
  %v3336 = vld [vmem:[%s2 + $0x4e0] sm:$0xff]
  %v3337 = vld [vmem:[%s2 + $0x4e8] sm:$0xff]
  %v3338 = vld [vmem:[%s2 + $0x4f0] sm:$0xff]
  %v3339 = vld [vmem:[%s2 + $0x4f8] sm:$0xff]
  %v3340 = vld [vmem:[%s2 + $0x500] sm:$0xff]
  %v3341 = vld [vmem:[%s2 + $0x508] sm:$0xff]
  %v3342 = vld [vmem:[%s2 + $0x510] sm:$0xff]
  %v3343 = vld [vmem:[%s2 + $0x518] sm:$0xff]
  %v3344 = vld [vmem:[%s2 + $0x520] sm:$0xff]
  %v3345 = vld [vmem:[%s2 + $0x528] sm:$0xff]
  %v3346 = vld [vmem:[%s2 + $0x530] sm:$0xff]
  %v3347 = vld [vmem:[%s2 + $0x538] sm:$0xff]
  %v3348 = vld [vmem:[%s2 + $0x540] sm:$0xff]
  %v3349 = vld [vmem:[%s2 + $0x548] sm:$0xff]
  %v3350 = vld [vmem:[%s2 + $0x550] sm:$0xff]
  %v3351 = vld [vmem:[%s2 + $0x558] sm:$0xff]
  %v3352 = vld [vmem:[%s2 + $0x560] sm:$0xff]
  %v3353 = vld [vmem:[%s2 + $0x568] sm:$0xff]
  %v3354 = vld [vmem:[%s2 + $0x570] sm:$0xff]
  %v3355 = vld [vmem:[%s2 + $0x578] sm:$0xff]
  %v3356 = vld [vmem:[%s2 + $0x580] sm:$0xff]
  %v3357 = vld [vmem:[%s2 + $0x588] sm:$0xff]
  %v3358 = vld [vmem:[%s2 + $0x590] sm:$0xff]
  %v3359 = vld [vmem:[%s2 + $0x598] sm:$0xff]
  %v3360 = vld [vmem:[%s2 + $0x5a0] sm:$0xff]
  %v3361 = vld [vmem:[%s2 + $0x5a8] sm:$0xff]
  %v3362 = vld [vmem:[%s2 + $0x5b0] sm:$0xff]
  %v3363 = vld [vmem:[%s2 + $0x5b8] sm:$0xff]
  %v3364 = vld [vmem:[%s2 + $0x5c0] sm:$0xff]
  %v3365 = vld [vmem:[%s2 + $0x5c8] sm:$0xff]
  %v3366 = vld [vmem:[%s2 + $0x5d0] sm:$0xff]
  %v3367 = vld [vmem:[%s2 + $0x5d8] sm:$0xff]
  %v3368 = vld [vmem:[%s2 + $0x5e0] sm:$0xff]
  %v3369 = vld [vmem:[%s2 + $0x5e8] sm:$0xff]
  %v3370 = vld [vmem:[%s2 + $0x5f0] sm:$0xff]
  %v3371 = vld [vmem:[%s2 + $0x5f8] sm:$0xff]
  %v3372 = vld [vmem:[%s2 + $0x600] sm:$0xff]
  %v3373 = vld [vmem:[%s2 + $0x608] sm:$0xff]
  %v3374 = vld [vmem:[%s2 + $0x610] sm:$0xff]
  %v3375 = vld [vmem:[%s2 + $0x618] sm:$0xff]
  %v3376 = vld [vmem:[%s2 + $0x620] sm:$0xff]
  %v3377 = vld [vmem:[%s2 + $0x628] sm:$0xff]
  %v3378 = vld [vmem:[%s2 + $0x630] sm:$0xff]
  %v3379 = vld [vmem:[%s2 + $0x638] sm:$0xff]
  %v3380 = vld [vmem:[%s2 + $0x640] sm:$0xff]
  %v3381 = vld [vmem:[%s2 + $0x648] sm:$0xff]
  %v3382 = vld [vmem:[%s2 + $0x650] sm:$0xff]
  %v3383 = vld [vmem:[%s2 + $0x658] sm:$0xff]
  %v3384 = vld [vmem:[%s2 + $0x660] sm:$0xff]
  %v3385 = vld [vmem:[%s2 + $0x668] sm:$0xff]
  %v3386 = vld [vmem:[%s2 + $0x670] sm:$0xff]
  %v3387 = vld [vmem:[%s2 + $0x678] sm:$0xff]
  %v3388 = vld [vmem:[%s2 + $0x680] sm:$0xff]
  %v3389 = vld [vmem:[%s2 + $0x688] sm:$0xff]
  %v3390 = vld [vmem:[%s2 + $0x690] sm:$0xff]
  %v3391 = vld [vmem:[%s2 + $0x698] sm:$0xff]
  %v3392 = vld [vmem:[%s2 + $0x6a0] sm:$0xff]
  %v3393 = vld [vmem:[%s2 + $0x6a8] sm:$0xff]
  %v3394 = vld [vmem:[%s2 + $0x6b0] sm:$0xff]
  %v3395 = vld [vmem:[%s2 + $0x6b8] sm:$0xff]
  %v3396 = vld [vmem:[%s2 + $0x6c0] sm:$0xff]
  %v3397 = vld [vmem:[%s2 + $0x6c8] sm:$0xff]
  %v3398 = vld [vmem:[%s2 + $0x6d0] sm:$0xff]
  %v3399 = vld [vmem:[%s2 + $0x6d8] sm:$0xff]
  %v3400 = vld [vmem:[%s2 + $0x6e0] sm:$0xff]
  %v3401 = vld [vmem:[%s2 + $0x6e8] sm:$0xff]
  %v3402 = vld [vmem:[%s2 + $0x6f0] sm:$0xff]
  %v3403 = vld [vmem:[%s2 + $0x6f8] sm:$0xff]
  %v3404 = vld [vmem:[%s2 + $0x700] sm:$0xff]
  %v3405 = vld [vmem:[%s2 + $0x708] sm:$0xff]
  %v3406 = vld [vmem:[%s2 + $0x710] sm:$0xff]
  %v3407 = vld [vmem:[%s2 + $0x718] sm:$0xff]
  %v3408 = vld [vmem:[%s2 + $0x720] sm:$0xff]
  %v3409 = vld [vmem:[%s2 + $0x728] sm:$0xff]
  %v3410 = vld [vmem:[%s2 + $0x730] sm:$0xff]
  %v3411 = vld [vmem:[%s2 + $0x738] sm:$0xff]
  %v3412 = vld [vmem:[%s2 + $0x740] sm:$0xff]
  %v3413 = vld [vmem:[%s2 + $0x748] sm:$0xff]
  %v3414 = vld [vmem:[%s2 + $0x750] sm:$0xff]
  %v3415 = vld [vmem:[%s2 + $0x758] sm:$0xff]
  %v3416 = vld [vmem:[%s2 + $0x760] sm:$0xff]
  %v3417 = vld [vmem:[%s2 + $0x768] sm:$0xff]
  %v3418 = vld [vmem:[%s2 + $0x770] sm:$0xff]
  %v3419 = vld [vmem:[%s2 + $0x778] sm:$0xff]
  %v3420 = vld [vmem:[%s2 + $0x780] sm:$0xff]
  %v3421 = vld [vmem:[%s2 + $0x788] sm:$0xff]
  %v3422 = vld [vmem:[%s2 + $0x790] sm:$0xff]
  %v3423 = vld [vmem:[%s2 + $0x798] sm:$0xff]
  %v3424 = vld [vmem:[%s2 + $0x7a0] sm:$0xff]
  %v3425 = vld [vmem:[%s2 + $0x7a8] sm:$0xff]
  %v3426 = vld [vmem:[%s2 + $0x7b0] sm:$0xff]
  %v3427 = vld [vmem:[%s2 + $0x7b8] sm:$0xff]
  %v3428 = vld [vmem:[%s2 + $0x7c0] sm:$0xff]
  %v3429 = vld [vmem:[%s2 + $0x7c8] sm:$0xff]
  %v3430 = vld [vmem:[%s2 + $0x7d0] sm:$0xff]
  %v3431 = vld [vmem:[%s2 + $0x7d8] sm:$0xff]
  %v3432 = vld [vmem:[%s2 + $0x7e0] sm:$0xff]
  %v3433 = vld [vmem:[%s2 + $0x7e8] sm:$0xff]
  %v3434 = vld [vmem:[%s2 + $0x7f0] sm:$0xff]
  %v3435 = vld [vmem:[%s2 + $0x7f8] sm:$0xff]
  %v3436 = vld [vmem:[%s2 + $0x800] sm:$0xff]
  %v3437 = vld [vmem:[%s2 + $0x808] sm:$0xff]
  %v3438 = vld [vmem:[%s2 + $0x810] sm:$0xff]
  %v3439 = vld [vmem:[%s2 + $0x818] sm:$0xff]
  %v3440 = vld [vmem:[%s2 + $0x820] sm:$0xff]
  %v3441 = vld [vmem:[%s2 + $0x828] sm:$0xff]
  %v3442 = vld [vmem:[%s2 + $0x830] sm:$0xff]
  %v3443 = vld [vmem:[%s2 + $0x838] sm:$0xff]
  %v3444 = vld [vmem:[%s2 + $0x840] sm:$0xff]
  %v3445 = vld [vmem:[%s2 + $0x848] sm:$0xff]
  %v3446 = vld [vmem:[%s2 + $0x850] sm:$0xff]
  %v3447 = vld [vmem:[%s2 + $0x858] sm:$0xff]
  %v3448 = vld [vmem:[%s2 + $0x860] sm:$0xff]
  %v3449 = vld [vmem:[%s2 + $0x868] sm:$0xff]
  %v3450 = vld [vmem:[%s2 + $0x870] sm:$0xff]
  %v3451 = vld [vmem:[%s2 + $0x878] sm:$0xff]
  %v3452 = vld [vmem:[%s2 + $0x880] sm:$0xff]
  %v3453 = vld [vmem:[%s2 + $0x888] sm:$0xff]
  %v3454 = vld [vmem:[%s2 + $0x890] sm:$0xff]
  %v3455 = vld [vmem:[%s2 + $0x898] sm:$0xff]
  %v3456 = vld [vmem:[%s2 + $0x8a0] sm:$0xff]
  %v3457 = vld [vmem:[%s2 + $0x8a8] sm:$0xff]
  %v3458 = vld [vmem:[%s2 + $0x8b0] sm:$0xff]
  %v3459 = vld [vmem:[%s2 + $0x8b8] sm:$0xff]
  %v3460 = vld [vmem:[%s2 + $0x8c0] sm:$0xff]
  %v3461 = vld [vmem:[%s2 + $0x8c8] sm:$0xff]
  %v3462 = vld [vmem:[%s2 + $0x8d0] sm:$0xff]
  %v3463 = vld [vmem:[%s2 + $0x8d8] sm:$0xff]
  %v3464 = vld [vmem:[%s2 + $0x8e0] sm:$0xff]
  %v3465 = vld [vmem:[%s2 + $0x8e8] sm:$0xff]
  %v3466 = vld [vmem:[%s2 + $0x8f0] sm:$0xff]
  %v3467 = vld [vmem:[%s2 + $0x8f8] sm:$0xff]
  %v3468 = vld [vmem:[%s2 + $0x900] sm:$0xff]
  %v3469 = vld [vmem:[%s2 + $0x908] sm:$0xff]
  %v3470 = vld [vmem:[%s2 + $0x910] sm:$0xff]
  %v3471 = vld [vmem:[%s2 + $0x918] sm:$0xff]
  %v3472 = vld [vmem:[%s2 + $0x920] sm:$0xff]
  %v3473 = vld [vmem:[%s2 + $0x928] sm:$0xff]
  %v3474 = vld [vmem:[%s2 + $0x930] sm:$0xff]
  %v3475 = vld [vmem:[%s2 + $0x938] sm:$0xff]
  %v3476 = vld [vmem:[%s2 + $0x940] sm:$0xff]
  %v3477 = vld [vmem:[%s2 + $0x948] sm:$0xff]
  %v3478 = vld [vmem:[%s2 + $0x950] sm:$0xff]
  %v3479 = vld [vmem:[%s2 + $0x958] sm:$0xff]
  %v3480 = vld [vmem:[%s2 + $0x960] sm:$0xff]
  %v3481 = vld [vmem:[%s2 + $0x968] sm:$0xff]
  %v3482 = vld [vmem:[%s2 + $0x970] sm:$0xff]
  %v3483 = vld [vmem:[%s2 + $0x978] sm:$0xff]
  %v3484 = vld [vmem:[%s2 + $0x980] sm:$0xff]
  %v3485 = vld [vmem:[%s2 + $0x988] sm:$0xff]
  %v3486 = vld [vmem:[%s2 + $0x990] sm:$0xff]
  %v3487 = vld [vmem:[%s2 + $0x998] sm:$0xff]
  %v3488 = vld [vmem:[%s2 + $0x9a0] sm:$0xff]
  %v3489 = vld [vmem:[%s2 + $0x9a8] sm:$0xff]
  %v3490 = vld [vmem:[%s2 + $0x9b0] sm:$0xff]
  %v3491 = vld [vmem:[%s2 + $0x9b8] sm:$0xff]
  %v3492 = vld [vmem:[%s2 + $0x9c0] sm:$0xff]
  %v3493 = vld [vmem:[%s2 + $0x9c8] sm:$0xff]
  %v3494 = vld [vmem:[%s2 + $0x9d0] sm:$0xff]
  %v3495 = vld [vmem:[%s2 + $0x9d8] sm:$0xff]
  %v3496 = vld [vmem:[%s2 + $0x9e0] sm:$0xff]
  %v3497 = vld [vmem:[%s2 + $0x9e8] sm:$0xff]
  %v3498 = vld [vmem:[%s2 + $0x9f0] sm:$0xff]
  %v3499 = vld [vmem:[%s2 + $0x9f8] sm:$0xff]
  %v3500 = vld [vmem:[%s2 + $0xa00] sm:$0xff]
  %v3501 = vld [vmem:[%s2 + $0xa08] sm:$0xff]
  %v3502 = vld [vmem:[%s2 + $0xa10] sm:$0xff]
  %v3503 = vld [vmem:[%s2 + $0xa18] sm:$0xff]
  %v3504 = vld [vmem:[%s2 + $0xa20] sm:$0xff]
  %v3505 = vld [vmem:[%s2 + $0xa28] sm:$0xff]
  %v3506 = vld [vmem:[%s2 + $0xa30] sm:$0xff]
  %v3507 = vld [vmem:[%s2 + $0xa38] sm:$0xff]
  %v3508 = vld [vmem:[%s2 + $0xa40] sm:$0xff]
  %v3509 = vld [vmem:[%s2 + $0xa48] sm:$0xff]
  %v3510 = vld [vmem:[%s2 + $0xa50] sm:$0xff]
  %v3511 = vld [vmem:[%s2 + $0xa58] sm:$0xff]
  %v3512 = vld [vmem:[%s2 + $0xa60] sm:$0xff]
  %v3513 = vld [vmem:[%s2 + $0xa68] sm:$0xff]
  %v3514 = vld [vmem:[%s2 + $0xa70] sm:$0xff]
  %v3515 = vld [vmem:[%s2 + $0xa78] sm:$0xff]
  %v3516 = vld [vmem:[%s2 + $0xa80] sm:$0xff]
  %v3517 = vld [vmem:[%s2 + $0xa88] sm:$0xff]
  %v3518 = vld [vmem:[%s2 + $0xa90] sm:$0xff]
  %v3519 = vld [vmem:[%s2 + $0xa98] sm:$0xff]
  %v3520 = vld [vmem:[%s2 + $0xaa0] sm:$0xff]
  %v3521 = vld [vmem:[%s2 + $0xaa8] sm:$0xff]
  %v3522 = vld [vmem:[%s2 + $0xab0] sm:$0xff]
  %v3523 = vld [vmem:[%s2 + $0xab8] sm:$0xff]
  %v3524 = vld [vmem:[%s2 + $0xac0] sm:$0xff]
  %v3525 = vld [vmem:[%s2 + $0xac8] sm:$0xff]
  %v3526 = vld [vmem:[%s2 + $0xad0] sm:$0xff]
  %v3527 = vld [vmem:[%s2 + $0xad8] sm:$0xff]
  %v3528 = vld [vmem:[%s2 + $0xae0] sm:$0xff]
  %v3529 = vld [vmem:[%s2 + $0xae8] sm:$0xff]
  %v3530 = vld [vmem:[%s2 + $0xaf0] sm:$0xff]
  %v3531 = vld [vmem:[%s2 + $0xaf8] sm:$0xff]
  %v3532 = vld [vmem:[%s2 + $0xb00] sm:$0xff]
  %v3533 = vld [vmem:[%s2 + $0xb08] sm:$0xff]
  %v3534 = vld [vmem:[%s2 + $0xb10] sm:$0xff]
  %v3535 = vld [vmem:[%s2 + $0xb18] sm:$0xff]
  %v3536 = vld [vmem:[%s2 + $0xb20] sm:$0xff]
  %v3537 = vld [vmem:[%s2 + $0xb28] sm:$0xff]
  %v3538 = vld [vmem:[%s2 + $0xb30] sm:$0xff]
  %v3539 = vld [vmem:[%s2 + $0xb38] sm:$0xff]
  %v3540 = vld [vmem:[%s2 + $0xb40] sm:$0xff]
  %v3541 = vld [vmem:[%s2 + $0xb48] sm:$0xff]
  %v3542 = vld [vmem:[%s2 + $0xb50] sm:$0xff]
  %v3543 = vld [vmem:[%s2 + $0xb58] sm:$0xff]
  %v3544 = vld [vmem:[%s2 + $0xb60] sm:$0xff]
  %v3545 = vld [vmem:[%s2 + $0xb68] sm:$0xff]
  %v3546 = vld [vmem:[%s2 + $0xb70] sm:$0xff]
  %v3547 = vld [vmem:[%s2 + $0xb78] sm:$0xff]
  %v3548 = vld [vmem:[%s2 + $0xb80] sm:$0xff]
  %v3549 = vld [vmem:[%s2 + $0xb88] sm:$0xff]
  %v3550 = vld [vmem:[%s2 + $0xb90] sm:$0xff]
  %v3551 = vld [vmem:[%s2 + $0xb98] sm:$0xff]
  %v3552 = vld [vmem:[%s2 + $0xba0] sm:$0xff]
  %v3553 = vld [vmem:[%s2 + $0xba8] sm:$0xff]
  %v3554 = vld [vmem:[%s2 + $0xbb0] sm:$0xff]
  %v3555 = vld [vmem:[%s2 + $0xbb8] sm:$0xff]
  %v3556 = vld [vmem:[%s2 + $0xbc0] sm:$0xff]
  %v3557 = vld [vmem:[%s2 + $0xbc8] sm:$0xff]
  %v3558 = vld [vmem:[%s2 + $0xbd0] sm:$0xff]
  %v3559 = vld [vmem:[%s2 + $0xbd8] sm:$0xff]
  %v3560 = vld [vmem:[%s2 + $0xbe0] sm:$0xff]
  %v3561 = vld [vmem:[%s2 + $0xbe8] sm:$0xff]
  %v3562 = vld [vmem:[%s2 + $0xbf0] sm:$0xff]
  %v3563 = vld [vmem:[%s2 + $0xbf8] sm:$0xff]
  %v3564 = vld [vmem:[%s2 + $0xc00] sm:$0xff]
  %v3565 = vld [vmem:[%s2 + $0xc08] sm:$0xff]
  %v3566 = vld [vmem:[%s2 + $0xc10] sm:$0xff]
  %v3567 = vld [vmem:[%s2 + $0xc18] sm:$0xff]
  %v3568 = vld [vmem:[%s2 + $0xc20] sm:$0xff]
  %v3569 = vld [vmem:[%s2 + $0xc28] sm:$0xff]
  %v3570 = vld [vmem:[%s2 + $0xc30] sm:$0xff]
  %v3571 = vld [vmem:[%s2 + $0xc38] sm:$0xff]
  %v3572 = vld [vmem:[%s2 + $0xc40] sm:$0xff]
  %v3573 = vld [vmem:[%s2 + $0xc48] sm:$0xff]
  %v3574 = vld [vmem:[%s2 + $0xc50] sm:$0xff]
  %v3575 = vld [vmem:[%s2 + $0xc58] sm:$0xff]
  %v3576 = vld [vmem:[%s2 + $0xc60] sm:$0xff]
  %v3577 = vld [vmem:[%s2 + $0xc68] sm:$0xff]
  %v3578 = vld [vmem:[%s2 + $0xc70] sm:$0xff]
  %v3579 = vld [vmem:[%s2 + $0xc78] sm:$0xff]
  %v3580 = vld [vmem:[%s2 + $0xc80] sm:$0xff]
  %v3581 = vld [vmem:[%s2 + $0xc88] sm:$0xff]
  %v3582 = vld [vmem:[%s2 + $0xc90] sm:$0xff]
  %v3583 = vld [vmem:[%s2 + $0xc98] sm:$0xff]
  %v3584 = vld [vmem:[%s2 + $0xca0] sm:$0xff]
  %v3585 = vld [vmem:[%s2 + $0xca8] sm:$0xff]
  %v3586 = vld [vmem:[%s2 + $0xcb0] sm:$0xff]
  %v3587 = vld [vmem:[%s2 + $0xcb8] sm:$0xff]
  %v3588 = vld [vmem:[%s2 + $0xcc0] sm:$0xff]
  %v3589 = vld [vmem:[%s2 + $0xcc8] sm:$0xff]
  %v3590 = vld [vmem:[%s2 + $0xcd0] sm:$0xff]
  %v3591 = vld [vmem:[%s2 + $0xcd8] sm:$0xff]
  %v3592 = vld [vmem:[%s2 + $0xce0] sm:$0xff]
  %v3593 = vld [vmem:[%s2 + $0xce8] sm:$0xff]
  %v3594 = vld [vmem:[%s2 + $0xcf0] sm:$0xff]
  %v3595 = vld [vmem:[%s2 + $0xcf8] sm:$0xff]
  %v3596 = vld [vmem:[%s2 + $0xd00] sm:$0xff]
  %v3597 = vld [vmem:[%s2 + $0xd08] sm:$0xff]
  %v3598 = vld [vmem:[%s2 + $0xd10] sm:$0xff]
  %v3599 = vld [vmem:[%s2 + $0xd18] sm:$0xff]
  %v3600 = vld [vmem:[%s2 + $0xd20] sm:$0xff]
  %v3601 = vld [vmem:[%s2 + $0xd28] sm:$0xff]
  %v3602 = vld [vmem:[%s2 + $0xd30] sm:$0xff]
  %v3603 = vld [vmem:[%s2 + $0xd38] sm:$0xff]
  %v3604 = vld [vmem:[%s2 + $0xd40] sm:$0xff]
  %v3605 = vld [vmem:[%s2 + $0xd48] sm:$0xff]
  %v3606 = vld [vmem:[%s2 + $0xd50] sm:$0xff]
  %v3607 = vld [vmem:[%s2 + $0xd58] sm:$0xff]
  %v3608 = vld [vmem:[%s2 + $0xd60] sm:$0xff]
  %v3609 = vld [vmem:[%s2 + $0xd68] sm:$0xff]
  %v3610 = vld [vmem:[%s2 + $0xd70] sm:$0xff]
  %v3611 = vld [vmem:[%s2 + $0xd78] sm:$0xff]
  %v3612 = vld [vmem:[%s2 + $0xd80] sm:$0xff]
  %v3613 = vld [vmem:[%s2 + $0xd88] sm:$0xff]
  %v3614 = vld [vmem:[%s2 + $0xd90] sm:$0xff]
  %v3615 = vld [vmem:[%s2 + $0xd98] sm:$0xff]
  %v3616 = vld [vmem:[%s2 + $0xda0] sm:$0xff]
  %v3617 = vld [vmem:[%s2 + $0xda8] sm:$0xff]
  %v3618 = vld [vmem:[%s2 + $0xdb0] sm:$0xff]
  %v3619 = vld [vmem:[%s2 + $0xdb8] sm:$0xff]
  %v3620 = vld [vmem:[%s2 + $0xdc0] sm:$0xff]
  %v3621 = vld [vmem:[%s2 + $0xdc8] sm:$0xff]
  %v3622 = vld [vmem:[%s2 + $0xdd0] sm:$0xff]
  %v3623 = vld [vmem:[%s2 + $0xdd8] sm:$0xff]
  %v3624 = vld [vmem:[%s2 + $0xde0] sm:$0xff]
  %v3625 = vld [vmem:[%s2 + $0xde8] sm:$0xff]
  %v3626 = vld [vmem:[%s2 + $0xdf0] sm:$0xff]
  %v3627 = vld [vmem:[%s2 + $0xdf8] sm:$0xff]
  %v3628 = vld [vmem:[%s2 + $0xe00] sm:$0xff]
  %v3629 = vld [vmem:[%s2 + $0xe08] sm:$0xff]
  %v3630 = vld [vmem:[%s2 + $0xe10] sm:$0xff]
  %v3631 = vld [vmem:[%s2 + $0xe18] sm:$0xff]
  %v3632 = vld [vmem:[%s2 + $0xe20] sm:$0xff]
  %v3633 = vld [vmem:[%s2 + $0xe28] sm:$0xff]
  %v3634 = vld [vmem:[%s2 + $0xe30] sm:$0xff]
  %v3635 = vld [vmem:[%s2 + $0xe38] sm:$0xff]
  %v3636 = vld [vmem:[%s2 + $0xe40] sm:$0xff]
  %v3637 = vld [vmem:[%s2 + $0xe48] sm:$0xff]
  %v3638 = vld [vmem:[%s2 + $0xe50] sm:$0xff]
  %v3639 = vld [vmem:[%s2 + $0xe58] sm:$0xff]
  %v3640 = vld [vmem:[%s2 + $0xe60] sm:$0xff]
  %v3641 = vld [vmem:[%s2 + $0xe68] sm:$0xff]
  %v3642 = vld [vmem:[%s2 + $0xe70] sm:$0xff]
  %v3643 = vld [vmem:[%s2 + $0xe78] sm:$0xff]
  %v3644 = vld [vmem:[%s2 + $0xe80] sm:$0xff]
  %v3645 = vld [vmem:[%s2 + $0xe88] sm:$0xff]
  %v3646 = vld [vmem:[%s2 + $0xe90] sm:$0xff]
  %v3647 = vld [vmem:[%s2 + $0xe98] sm:$0xff]
  %v3648 = vld [vmem:[%s2 + $0xea0] sm:$0xff]
  %v3649 = vld [vmem:[%s2 + $0xea8] sm:$0xff]
  %v3650 = vld [vmem:[%s2 + $0xeb0] sm:$0xff]
  %v3651 = vld [vmem:[%s2 + $0xeb8] sm:$0xff]
  %v3652 = vld [vmem:[%s2 + $0xec0] sm:$0xff]
  %v3653 = vld [vmem:[%s2 + $0xec8] sm:$0xff]
  %v3654 = vld [vmem:[%s2 + $0xed0] sm:$0xff]
  %v3655 = vld [vmem:[%s2 + $0xed8] sm:$0xff]
  %v3656 = vld [vmem:[%s2 + $0xee0] sm:$0xff]
  %v3657 = vld [vmem:[%s2 + $0xee8] sm:$0xff]
  %v3658 = vld [vmem:[%s2 + $0xef0] sm:$0xff]
  %v3659 = vld [vmem:[%s2 + $0xef8] sm:$0xff]
  %v3660 = vld [vmem:[%s2 + $0xf00] sm:$0xff]
  %v3661 = vld [vmem:[%s2 + $0xf08] sm:$0xff]
  %v3662 = vld [vmem:[%s2 + $0xf10] sm:$0xff]
  %v3663 = vld [vmem:[%s2 + $0xf18] sm:$0xff]
  %v3664 = vld [vmem:[%s2 + $0xf20] sm:$0xff]
  %v3665 = vld [vmem:[%s2 + $0xf28] sm:$0xff]
  %v3666 = vld [vmem:[%s2 + $0xf30] sm:$0xff]
  %v3667 = vld [vmem:[%s2 + $0xf38] sm:$0xff]
  %v3668 = vld [vmem:[%s2 + $0xf40] sm:$0xff]
  %v3669 = vld [vmem:[%s2 + $0xf48] sm:$0xff]
  %v3670 = vld [vmem:[%s2 + $0xf50] sm:$0xff]
  %v3671 = vld [vmem:[%s2 + $0xf58] sm:$0xff]
  %v3672 = vld [vmem:[%s2 + $0xf60] sm:$0xff]
  %v3673 = vld [vmem:[%s2 + $0xf68] sm:$0xff]
  %v3674 = vld [vmem:[%s2 + $0xf70] sm:$0xff]
  %v3675 = vld [vmem:[%s2 + $0xf78] sm:$0xff]
  %v3676 = vld [vmem:[%s2 + $0xf80] sm:$0xff]
  %v3677 = vld [vmem:[%s2 + $0xf88] sm:$0xff]
  %v3678 = vld [vmem:[%s2 + $0xf90] sm:$0xff]
  %v3679 = vld [vmem:[%s2 + $0xf98] sm:$0xff]
  %v3680 = vld [vmem:[%s2 + $0xfa0] sm:$0xff]
  %v3681 = vld [vmem:[%s2 + $0xfa8] sm:$0xff]
  %v3682 = vld [vmem:[%s2 + $0xfb0] sm:$0xff]
  %v3683 = vld [vmem:[%s2 + $0xfb8] sm:$0xff]
  %v3684 = vld [vmem:[%s2 + $0xfc0] sm:$0xff]
  %v3685 = vld [vmem:[%s2 + $0xfc8] sm:$0xff]
  %v3686 = vld [vmem:[%s2 + $0xfd0] sm:$0xff]
  %v3687 = vld [vmem:[%s2 + $0xfd8] sm:$0xff]
  %v3688 = vld [vmem:[%s2 + $0xfe0] sm:$0xff]
  %v3689 = vld [vmem:[%s2 + $0xfe8] sm:$0xff]
  %v3690 = vld [vmem:[%s2 + $0xff0] sm:$0xff]
  %v3691 = vld [vmem:[%s2 + $0xff8] sm:$0xff]
  %3692 = vmatpush.msra.mxu0 %v3300
  %3693 = vmatpush.msra.mxu0 %v3292
  %3694 = vmatpush.msra.mxu0 %v3284
  %3695 = vmatpush.msra.mxu0 %v3276
  %3696 = vmatpush.msra.mxu0 %v3268
  %3697 = vmatpush.msra.mxu0 %v3260
  %3698 = vmatpush.msra.mxu0 %v3252
  %3699 = vmatpush.msra.mxu0 %v3244
  %3700 = vmatpush.msra.mxu0 %v3236
  %3701 = vmatpush.msra.mxu0 %v3228
  %3702 = vmatpush.msra.mxu0 %v3220
  %3703 = vmatpush.msra.mxu0 %v3212
  %3704 = vmatpush.msra.mxu0 %v3204
  %3705 = vmatpush.msra.mxu0 %v3196
  %3706 = vmatpush.msra.mxu0 %v3188
  %3707 = vmatpush.msra.mxu0 %v3180
  %3708 = vmatmul.f32.gmra.mxu0 %v3167
  %v3709 = vpop.f32.mrf.mxu0
  %v3710 = vadd.f32 0.0, %v3709
  %3711 = vdwg.mxu0
  %3712 = vmatpush.msra.mxu0 %v3428
  %3713 = vmatpush.msra.mxu0 %v3420
  %3714 = vmatpush.msra.mxu0 %v3412
  %3715 = vmatpush.msra.mxu0 %v3404
  %3716 = vmatpush.msra.mxu0 %v3396
  %3717 = vmatpush.msra.mxu0 %v3388
  %3718 = vmatpush.msra.mxu0 %v3380
  %3719 = vmatpush.msra.mxu0 %v3372
  %3720 = vmatpush.msra.mxu0 %v3364
  %3721 = vmatpush.msra.mxu0 %v3356
  %3722 = vmatpush.msra.mxu0 %v3348
  %3723 = vmatpush.msra.mxu0 %v3340
  %3724 = vmatpush.msra.mxu0 %v3332
  %3725 = vmatpush.msra.mxu0 %v3324
  %3726 = vmatpush.msra.mxu0 %v3316
  %3727 = vmatpush.msra.mxu0 %v3308
  %3728 = vmatmul.f32.gmra.mxu0 %v3168
  %v3729 = vpop.f32.mrf.mxu0
  %v3730 = vadd.f32 %v3710, %v3729
  %3731 = vdwg.mxu0
  %3732 = vmatpush.msra.mxu0 %v3556
  %3733 = vmatpush.msra.mxu0 %v3548
  %3734 = vmatpush.msra.mxu0 %v3540
  %3735 = vmatpush.msra.mxu0 %v3532
  %3736 = vmatpush.msra.mxu0 %v3524
  %3737 = vmatpush.msra.mxu0 %v3516
  %3738 = vmatpush.msra.mxu0 %v3508
  %3739 = vmatpush.msra.mxu0 %v3500
  %3740 = vmatpush.msra.mxu0 %v3492
  %3741 = vmatpush.msra.mxu0 %v3484
  %3742 = vmatpush.msra.mxu0 %v3476
  %3743 = vmatpush.msra.mxu0 %v3468
  %3744 = vmatpush.msra.mxu0 %v3460
  %3745 = vmatpush.msra.mxu0 %v3452
  %3746 = vmatpush.msra.mxu0 %v3444
  %3747 = vmatpush.msra.mxu0 %v3436
  %3748 = vmatmul.f32.gmra.mxu0 %v3169
  %v3749 = vpop.f32.mrf.mxu0
  %v3750 = vadd.f32 %v3730, %v3749
  %3751 = vdwg.mxu0
  %3752 = vmatpush.msra.mxu0 %v3684
  %3753 = vmatpush.msra.mxu0 %v3676
  %3754 = vmatpush.msra.mxu0 %v3668
  %3755 = vmatpush.msra.mxu0 %v3660
  %3756 = vmatpush.msra.mxu0 %v3652
  %3757 = vmatpush.msra.mxu0 %v3644
  %3758 = vmatpush.msra.mxu0 %v3636
  %3759 = vmatpush.msra.mxu0 %v3628
  %3760 = vmatpush.msra.mxu0 %v3620
  %3761 = vmatpush.msra.mxu0 %v3612
  %3762 = vmatpush.msra.mxu0 %v3604
  %3763 = vmatpush.msra.mxu0 %v3596
  %3764 = vmatpush.msra.mxu0 %v3588
  %3765 = vmatpush.msra.mxu0 %v3580
  %3766 = vmatpush.msra.mxu0 %v3572
  %3767 = vmatpush.msra.mxu0 %v3564
  %3768 = vmatmul.f32.gmra.mxu0 %v3170
  %v3769 = vpop.f32.mrf.mxu0
  %v3770 = vadd.f32 %v3750, %v3769
  %3771 = vdwg.mxu0
  %3772 = vmatpush.msra.mxu0 %v3301
  %3773 = vmatpush.msra.mxu0 %v3293
  %3774 = vmatpush.msra.mxu0 %v3285
  %3775 = vmatpush.msra.mxu0 %v3277
  %3776 = vmatpush.msra.mxu0 %v3269
  %3777 = vmatpush.msra.mxu0 %v3261
  %3778 = vmatpush.msra.mxu0 %v3253
  %3779 = vmatpush.msra.mxu0 %v3245
  %3780 = vmatpush.msra.mxu0 %v3237
  %3781 = vmatpush.msra.mxu0 %v3229
  %3782 = vmatpush.msra.mxu0 %v3221
  %3783 = vmatpush.msra.mxu0 %v3213
  %3784 = vmatpush.msra.mxu0 %v3205
  %3785 = vmatpush.msra.mxu0 %v3197
  %3786 = vmatpush.msra.mxu0 %v3189
  %3787 = vmatpush.msra.mxu0 %v3181
  %3788 = vmatmul.f32.gmra.mxu0 %v3167
  %v3789 = vpop.f32.mrf.mxu0
  %v3790 = vadd.f32 0.0, %v3789
  %3791 = vdwg.mxu0
  %3792 = vmatpush.msra.mxu0 %v3429
  %3793 = vmatpush.msra.mxu0 %v3421
  %3794 = vmatpush.msra.mxu0 %v3413
  %3795 = vmatpush.msra.mxu0 %v3405
  %3796 = vmatpush.msra.mxu0 %v3397
  %3797 = vmatpush.msra.mxu0 %v3389
  %3798 = vmatpush.msra.mxu0 %v3381
  %3799 = vmatpush.msra.mxu0 %v3373
  %3800 = vmatpush.msra.mxu0 %v3365
  %3801 = vmatpush.msra.mxu0 %v3357
  %3802 = vmatpush.msra.mxu0 %v3349
  %3803 = vmatpush.msra.mxu0 %v3341
  %3804 = vmatpush.msra.mxu0 %v3333
  %3805 = vmatpush.msra.mxu0 %v3325
  %3806 = vmatpush.msra.mxu0 %v3317
  %3807 = vmatpush.msra.mxu0 %v3309
  %3808 = vmatmul.f32.gmra.mxu0 %v3168
  %v3809 = vpop.f32.mrf.mxu0
  %v3810 = vadd.f32 %v3790, %v3809
  %3811 = vdwg.mxu0
  %3812 = vmatpush.msra.mxu0 %v3557
  %3813 = vmatpush.msra.mxu0 %v3549
  %3814 = vmatpush.msra.mxu0 %v3541
  %3815 = vmatpush.msra.mxu0 %v3533
  %3816 = vmatpush.msra.mxu0 %v3525
  %3817 = vmatpush.msra.mxu0 %v3517
  %3818 = vmatpush.msra.mxu0 %v3509
  %3819 = vmatpush.msra.mxu0 %v3501
  %3820 = vmatpush.msra.mxu0 %v3493
  %3821 = vmatpush.msra.mxu0 %v3485
  %3822 = vmatpush.msra.mxu0 %v3477
  %3823 = vmatpush.msra.mxu0 %v3469
  %3824 = vmatpush.msra.mxu0 %v3461
  %3825 = vmatpush.msra.mxu0 %v3453
  %3826 = vmatpush.msra.mxu0 %v3445
  %3827 = vmatpush.msra.mxu0 %v3437
  %3828 = vmatmul.f32.gmra.mxu0 %v3169
  %v3829 = vpop.f32.mrf.mxu0
  %v3830 = vadd.f32 %v3810, %v3829
  %3831 = vdwg.mxu0
  %3832 = vmatpush.msra.mxu0 %v3685
  %3833 = vmatpush.msra.mxu0 %v3677
  %3834 = vmatpush.msra.mxu0 %v3669
  %3835 = vmatpush.msra.mxu0 %v3661
  %3836 = vmatpush.msra.mxu0 %v3653
  %3837 = vmatpush.msra.mxu0 %v3645
  %3838 = vmatpush.msra.mxu0 %v3637
  %3839 = vmatpush.msra.mxu0 %v3629
  %3840 = vmatpush.msra.mxu0 %v3621
  %3841 = vmatpush.msra.mxu0 %v3613
  %3842 = vmatpush.msra.mxu0 %v3605
  %3843 = vmatpush.msra.mxu0 %v3597
  %3844 = vmatpush.msra.mxu0 %v3589
  %3845 = vmatpush.msra.mxu0 %v3581
  %3846 = vmatpush.msra.mxu0 %v3573
  %3847 = vmatpush.msra.mxu0 %v3565
  %3848 = vmatmul.f32.gmra.mxu0 %v3170
  %v3849 = vpop.f32.mrf.mxu0
  %v3850 = vadd.f32 %v3830, %v3849
  %3851 = vdwg.mxu0
  %3852 = vmatpush.msra.mxu0 %v3302
  %3853 = vmatpush.msra.mxu0 %v3294
  %3854 = vmatpush.msra.mxu0 %v3286
  %3855 = vmatpush.msra.mxu0 %v3278
  %3856 = vmatpush.msra.mxu0 %v3270
  %3857 = vmatpush.msra.mxu0 %v3262
  %3858 = vmatpush.msra.mxu0 %v3254
  %3859 = vmatpush.msra.mxu0 %v3246
  %3860 = vmatpush.msra.mxu0 %v3238
  %3861 = vmatpush.msra.mxu0 %v3230
  %3862 = vmatpush.msra.mxu0 %v3222
  %3863 = vmatpush.msra.mxu0 %v3214
  %3864 = vmatpush.msra.mxu0 %v3206
  %3865 = vmatpush.msra.mxu0 %v3198
  %3866 = vmatpush.msra.mxu0 %v3190
  %3867 = vmatpush.msra.mxu0 %v3182
  %3868 = vmatmul.f32.gmra.mxu0 %v3167
  %v3869 = vpop.f32.mrf.mxu0
  %v3870 = vadd.f32 0.0, %v3869
  %3871 = vdwg.mxu0
  %3872 = vmatpush.msra.mxu0 %v3430
  %3873 = vmatpush.msra.mxu0 %v3422
  %3874 = vmatpush.msra.mxu0 %v3414
  %3875 = vmatpush.msra.mxu0 %v3406
  %3876 = vmatpush.msra.mxu0 %v3398
  %3877 = vmatpush.msra.mxu0 %v3390
  %3878 = vmatpush.msra.mxu0 %v3382
  %3879 = vmatpush.msra.mxu0 %v3374
  %3880 = vmatpush.msra.mxu0 %v3366
  %3881 = vmatpush.msra.mxu0 %v3358
  %3882 = vmatpush.msra.mxu0 %v3350
  %3883 = vmatpush.msra.mxu0 %v3342
  %3884 = vmatpush.msra.mxu0 %v3334
  %3885 = vmatpush.msra.mxu0 %v3326
  %3886 = vmatpush.msra.mxu0 %v3318
  %3887 = vmatpush.msra.mxu0 %v3310
  %3888 = vmatmul.f32.gmra.mxu0 %v3168
  %v3889 = vpop.f32.mrf.mxu0
  %v3890 = vadd.f32 %v3870, %v3889
  %3891 = vdwg.mxu0
  %3892 = vmatpush.msra.mxu0 %v3558
  %3893 = vmatpush.msra.mxu0 %v3550
  %3894 = vmatpush.msra.mxu0 %v3542
  %3895 = vmatpush.msra.mxu0 %v3534
  %3896 = vmatpush.msra.mxu0 %v3526
  %3897 = vmatpush.msra.mxu0 %v3518
  %3898 = vmatpush.msra.mxu0 %v3510
  %3899 = vmatpush.msra.mxu0 %v3502
  %3900 = vmatpush.msra.mxu0 %v3494
  %3901 = vmatpush.msra.mxu0 %v3486
  %3902 = vmatpush.msra.mxu0 %v3478
  %3903 = vmatpush.msra.mxu0 %v3470
  %3904 = vmatpush.msra.mxu0 %v3462
  %3905 = vmatpush.msra.mxu0 %v3454
  %3906 = vmatpush.msra.mxu0 %v3446
  %3907 = vmatpush.msra.mxu0 %v3438
  %3908 = vmatmul.f32.gmra.mxu0 %v3169
  %v3909 = vpop.f32.mrf.mxu0
  %v3910 = vadd.f32 %v3890, %v3909
  %3911 = vdwg.mxu0
  %3912 = vmatpush.msra.mxu0 %v3686
  %3913 = vmatpush.msra.mxu0 %v3678
  %3914 = vmatpush.msra.mxu0 %v3670
  %3915 = vmatpush.msra.mxu0 %v3662
  %3916 = vmatpush.msra.mxu0 %v3654
  %3917 = vmatpush.msra.mxu0 %v3646
  %3918 = vmatpush.msra.mxu0 %v3638
  %3919 = vmatpush.msra.mxu0 %v3630
  %3920 = vmatpush.msra.mxu0 %v3622
  %3921 = vmatpush.msra.mxu0 %v3614
  %3922 = vmatpush.msra.mxu0 %v3606
  %3923 = vmatpush.msra.mxu0 %v3598
  %3924 = vmatpush.msra.mxu0 %v3590
  %3925 = vmatpush.msra.mxu0 %v3582
  %3926 = vmatpush.msra.mxu0 %v3574
  %3927 = vmatpush.msra.mxu0 %v3566
  %3928 = vmatmul.f32.gmra.mxu0 %v3170
  %v3929 = vpop.f32.mrf.mxu0
  %v3930 = vadd.f32 %v3910, %v3929
  %3931 = vdwg.mxu0
  %3932 = vmatpush.msra.mxu0 %v3303
  %3933 = vmatpush.msra.mxu0 %v3295
  %3934 = vmatpush.msra.mxu0 %v3287
  %3935 = vmatpush.msra.mxu0 %v3279
  %3936 = vmatpush.msra.mxu0 %v3271
  %3937 = vmatpush.msra.mxu0 %v3263
  %3938 = vmatpush.msra.mxu0 %v3255
  %3939 = vmatpush.msra.mxu0 %v3247
  %3940 = vmatpush.msra.mxu0 %v3239
  %3941 = vmatpush.msra.mxu0 %v3231
  %3942 = vmatpush.msra.mxu0 %v3223
  %3943 = vmatpush.msra.mxu0 %v3215
  %3944 = vmatpush.msra.mxu0 %v3207
  %3945 = vmatpush.msra.mxu0 %v3199
  %3946 = vmatpush.msra.mxu0 %v3191
  %3947 = vmatpush.msra.mxu0 %v3183
  %3948 = vmatmul.f32.gmra.mxu0 %v3167
  %v3949 = vpop.f32.mrf.mxu0
  %v3950 = vadd.f32 0.0, %v3949
  %3951 = vdwg.mxu0
  %3952 = vmatpush.msra.mxu0 %v3431
  %3953 = vmatpush.msra.mxu0 %v3423
  %3954 = vmatpush.msra.mxu0 %v3415
  %3955 = vmatpush.msra.mxu0 %v3407
  %3956 = vmatpush.msra.mxu0 %v3399
  %3957 = vmatpush.msra.mxu0 %v3391
  %3958 = vmatpush.msra.mxu0 %v3383
  %3959 = vmatpush.msra.mxu0 %v3375
  %3960 = vmatpush.msra.mxu0 %v3367
  %3961 = vmatpush.msra.mxu0 %v3359
  %3962 = vmatpush.msra.mxu0 %v3351
  %3963 = vmatpush.msra.mxu0 %v3343
  %3964 = vmatpush.msra.mxu0 %v3335
  %3965 = vmatpush.msra.mxu0 %v3327
  %3966 = vmatpush.msra.mxu0 %v3319
  %3967 = vmatpush.msra.mxu0 %v3311
  %3968 = vmatmul.f32.gmra.mxu0 %v3168
  %v3969 = vpop.f32.mrf.mxu0
  %v3970 = vadd.f32 %v3950, %v3969
  %3971 = vdwg.mxu0
  %3972 = vmatpush.msra.mxu0 %v3559
  %3973 = vmatpush.msra.mxu0 %v3551
  %3974 = vmatpush.msra.mxu0 %v3543
  %3975 = vmatpush.msra.mxu0 %v3535
  %3976 = vmatpush.msra.mxu0 %v3527
  %3977 = vmatpush.msra.mxu0 %v3519
  %3978 = vmatpush.msra.mxu0 %v3511
  %3979 = vmatpush.msra.mxu0 %v3503
  %3980 = vmatpush.msra.mxu0 %v3495
  %3981 = vmatpush.msra.mxu0 %v3487
  %3982 = vmatpush.msra.mxu0 %v3479
  %3983 = vmatpush.msra.mxu0 %v3471
  %3984 = vmatpush.msra.mxu0 %v3463
  %3985 = vmatpush.msra.mxu0 %v3455
  %3986 = vmatpush.msra.mxu0 %v3447
  %3987 = vmatpush.msra.mxu0 %v3439
  %3988 = vmatmul.f32.gmra.mxu0 %v3169
  %v3989 = vpop.f32.mrf.mxu0
  %v3990 = vadd.f32 %v3970, %v3989
  %3991 = vdwg.mxu0
  %3992 = vmatpush.msra.mxu0 %v3687
  %3993 = vmatpush.msra.mxu0 %v3679
  %3994 = vmatpush.msra.mxu0 %v3671
  %3995 = vmatpush.msra.mxu0 %v3663
  %3996 = vmatpush.msra.mxu0 %v3655
  %3997 = vmatpush.msra.mxu0 %v3647
  %3998 = vmatpush.msra.mxu0 %v3639
  %3999 = vmatpush.msra.mxu0 %v3631
  %4000 = vmatpush.msra.mxu0 %v3623
  %4001 = vmatpush.msra.mxu0 %v3615
  %4002 = vmatpush.msra.mxu0 %v3607
  %4003 = vmatpush.msra.mxu0 %v3599
  %4004 = vmatpush.msra.mxu0 %v3591
  %4005 = vmatpush.msra.mxu0 %v3583
  %4006 = vmatpush.msra.mxu0 %v3575
  %4007 = vmatpush.msra.mxu0 %v3567
  %4008 = vmatmul.f32.gmra.mxu0 %v3170
  %v4009 = vpop.f32.mrf.mxu0
  %v4010 = vadd.f32 %v3990, %v4009
  %4011 = vdwg.mxu0
  %4012 = vmatpush.msra.mxu0 %v3304
  %4013 = vmatpush.msra.mxu0 %v3296
  %4014 = vmatpush.msra.mxu0 %v3288
  %4015 = vmatpush.msra.mxu0 %v3280
  %4016 = vmatpush.msra.mxu0 %v3272
  %4017 = vmatpush.msra.mxu0 %v3264
  %4018 = vmatpush.msra.mxu0 %v3256
  %4019 = vmatpush.msra.mxu0 %v3248
  %4020 = vmatpush.msra.mxu0 %v3240
  %4021 = vmatpush.msra.mxu0 %v3232
  %4022 = vmatpush.msra.mxu0 %v3224
  %4023 = vmatpush.msra.mxu0 %v3216
  %4024 = vmatpush.msra.mxu0 %v3208
  %4025 = vmatpush.msra.mxu0 %v3200
  %4026 = vmatpush.msra.mxu0 %v3192
  %4027 = vmatpush.msra.mxu0 %v3184
  %4028 = vmatmul.f32.gmra.mxu0 %v3167
  %v4029 = vpop.f32.mrf.mxu0
  %v4030 = vadd.f32 0.0, %v4029
  %4031 = vdwg.mxu0
  %4032 = vmatpush.msra.mxu0 %v3432
  %4033 = vmatpush.msra.mxu0 %v3424
  %4034 = vmatpush.msra.mxu0 %v3416
  %4035 = vmatpush.msra.mxu0 %v3408
  %4036 = vmatpush.msra.mxu0 %v3400
  %4037 = vmatpush.msra.mxu0 %v3392
  %4038 = vmatpush.msra.mxu0 %v3384
  %4039 = vmatpush.msra.mxu0 %v3376
  %4040 = vmatpush.msra.mxu0 %v3368
  %4041 = vmatpush.msra.mxu0 %v3360
  %4042 = vmatpush.msra.mxu0 %v3352
  %4043 = vmatpush.msra.mxu0 %v3344
  %4044 = vmatpush.msra.mxu0 %v3336
  %4045 = vmatpush.msra.mxu0 %v3328
  %4046 = vmatpush.msra.mxu0 %v3320
  %4047 = vmatpush.msra.mxu0 %v3312
  %4048 = vmatmul.f32.gmra.mxu0 %v3168
  %v4049 = vpop.f32.mrf.mxu0
  %v4050 = vadd.f32 %v4030, %v4049
  %4051 = vdwg.mxu0
  %4052 = vmatpush.msra.mxu0 %v3560
  %4053 = vmatpush.msra.mxu0 %v3552
  %4054 = vmatpush.msra.mxu0 %v3544
  %4055 = vmatpush.msra.mxu0 %v3536
  %4056 = vmatpush.msra.mxu0 %v3528
  %4057 = vmatpush.msra.mxu0 %v3520
  %4058 = vmatpush.msra.mxu0 %v3512
  %4059 = vmatpush.msra.mxu0 %v3504
  %4060 = vmatpush.msra.mxu0 %v3496
  %4061 = vmatpush.msra.mxu0 %v3488
  %4062 = vmatpush.msra.mxu0 %v3480
  %4063 = vmatpush.msra.mxu0 %v3472
  %4064 = vmatpush.msra.mxu0 %v3464
  %4065 = vmatpush.msra.mxu0 %v3456
  %4066 = vmatpush.msra.mxu0 %v3448
  %4067 = vmatpush.msra.mxu0 %v3440
  %4068 = vmatmul.f32.gmra.mxu0 %v3169
  %v4069 = vpop.f32.mrf.mxu0
  %v4070 = vadd.f32 %v4050, %v4069
  %4071 = vdwg.mxu0
  %4072 = vmatpush.msra.mxu0 %v3688
  %4073 = vmatpush.msra.mxu0 %v3680
  %4074 = vmatpush.msra.mxu0 %v3672
  %4075 = vmatpush.msra.mxu0 %v3664
  %4076 = vmatpush.msra.mxu0 %v3656
  %4077 = vmatpush.msra.mxu0 %v3648
  %4078 = vmatpush.msra.mxu0 %v3640
  %4079 = vmatpush.msra.mxu0 %v3632
  %4080 = vmatpush.msra.mxu0 %v3624
  %4081 = vmatpush.msra.mxu0 %v3616
  %4082 = vmatpush.msra.mxu0 %v3608
  %4083 = vmatpush.msra.mxu0 %v3600
  %4084 = vmatpush.msra.mxu0 %v3592
  %4085 = vmatpush.msra.mxu0 %v3584
  %4086 = vmatpush.msra.mxu0 %v3576
  %4087 = vmatpush.msra.mxu0 %v3568
  %4088 = vmatmul.f32.gmra.mxu0 %v3170
  %v4089 = vpop.f32.mrf.mxu0
  %v4090 = vadd.f32 %v4070, %v4089
  %4091 = vdwg.mxu0
  %4092 = vmatpush.msra.mxu0 %v3305
  %4093 = vmatpush.msra.mxu0 %v3297
  %4094 = vmatpush.msra.mxu0 %v3289
  %4095 = vmatpush.msra.mxu0 %v3281
  %4096 = vmatpush.msra.mxu0 %v3273
  %4097 = vmatpush.msra.mxu0 %v3265
  %4098 = vmatpush.msra.mxu0 %v3257
  %4099 = vmatpush.msra.mxu0 %v3249
  %4100 = vmatpush.msra.mxu0 %v3241
  %4101 = vmatpush.msra.mxu0 %v3233
  %4102 = vmatpush.msra.mxu0 %v3225
  %4103 = vmatpush.msra.mxu0 %v3217
  %4104 = vmatpush.msra.mxu0 %v3209
  %4105 = vmatpush.msra.mxu0 %v3201
  %4106 = vmatpush.msra.mxu0 %v3193
  %4107 = vmatpush.msra.mxu0 %v3185
  %4108 = vmatmul.f32.gmra.mxu0 %v3167
  %v4109 = vpop.f32.mrf.mxu0
  %v4110 = vadd.f32 0.0, %v4109
  %4111 = vdwg.mxu0
  %4112 = vmatpush.msra.mxu0 %v3433
  %4113 = vmatpush.msra.mxu0 %v3425
  %4114 = vmatpush.msra.mxu0 %v3417
  %4115 = vmatpush.msra.mxu0 %v3409
  %4116 = vmatpush.msra.mxu0 %v3401
  %4117 = vmatpush.msra.mxu0 %v3393
  %4118 = vmatpush.msra.mxu0 %v3385
  %4119 = vmatpush.msra.mxu0 %v3377
  %4120 = vmatpush.msra.mxu0 %v3369
  %4121 = vmatpush.msra.mxu0 %v3361
  %4122 = vmatpush.msra.mxu0 %v3353
  %4123 = vmatpush.msra.mxu0 %v3345
  %4124 = vmatpush.msra.mxu0 %v3337
  %4125 = vmatpush.msra.mxu0 %v3329
  %4126 = vmatpush.msra.mxu0 %v3321
  %4127 = vmatpush.msra.mxu0 %v3313
  %4128 = vmatmul.f32.gmra.mxu0 %v3168
  %v4129 = vpop.f32.mrf.mxu0
  %v4130 = vadd.f32 %v4110, %v4129
  %4131 = vdwg.mxu0
  %4132 = vmatpush.msra.mxu0 %v3561
  %4133 = vmatpush.msra.mxu0 %v3553
  %4134 = vmatpush.msra.mxu0 %v3545
  %4135 = vmatpush.msra.mxu0 %v3537
  %4136 = vmatpush.msra.mxu0 %v3529
  %4137 = vmatpush.msra.mxu0 %v3521
  %4138 = vmatpush.msra.mxu0 %v3513
  %4139 = vmatpush.msra.mxu0 %v3505
  %4140 = vmatpush.msra.mxu0 %v3497
  %4141 = vmatpush.msra.mxu0 %v3489
  %4142 = vmatpush.msra.mxu0 %v3481
  %4143 = vmatpush.msra.mxu0 %v3473
  %4144 = vmatpush.msra.mxu0 %v3465
  %4145 = vmatpush.msra.mxu0 %v3457
  %4146 = vmatpush.msra.mxu0 %v3449
  %4147 = vmatpush.msra.mxu0 %v3441
  %4148 = vmatmul.f32.gmra.mxu0 %v3169
  %v4149 = vpop.f32.mrf.mxu0
  %v4150 = vadd.f32 %v4130, %v4149
  %4151 = vdwg.mxu0
  %4152 = vmatpush.msra.mxu0 %v3689
  %4153 = vmatpush.msra.mxu0 %v3681
  %4154 = vmatpush.msra.mxu0 %v3673
  %4155 = vmatpush.msra.mxu0 %v3665
  %4156 = vmatpush.msra.mxu0 %v3657
  %4157 = vmatpush.msra.mxu0 %v3649
  %4158 = vmatpush.msra.mxu0 %v3641
  %4159 = vmatpush.msra.mxu0 %v3633
  %4160 = vmatpush.msra.mxu0 %v3625
  %4161 = vmatpush.msra.mxu0 %v3617
  %4162 = vmatpush.msra.mxu0 %v3609
  %4163 = vmatpush.msra.mxu0 %v3601
  %4164 = vmatpush.msra.mxu0 %v3593
  %4165 = vmatpush.msra.mxu0 %v3585
  %4166 = vmatpush.msra.mxu0 %v3577
  %4167 = vmatpush.msra.mxu0 %v3569
  %4168 = vmatmul.f32.gmra.mxu0 %v3170
  %v4169 = vpop.f32.mrf.mxu0
  %v4170 = vadd.f32 %v4150, %v4169
  %4171 = vdwg.mxu0
  %4172 = vmatpush.msra.mxu0 %v3306
  %4173 = vmatpush.msra.mxu0 %v3298
  %4174 = vmatpush.msra.mxu0 %v3290
  %4175 = vmatpush.msra.mxu0 %v3282
  %4176 = vmatpush.msra.mxu0 %v3274
  %4177 = vmatpush.msra.mxu0 %v3266
  %4178 = vmatpush.msra.mxu0 %v3258
  %4179 = vmatpush.msra.mxu0 %v3250
  %4180 = vmatpush.msra.mxu0 %v3242
  %4181 = vmatpush.msra.mxu0 %v3234
  %4182 = vmatpush.msra.mxu0 %v3226
  %4183 = vmatpush.msra.mxu0 %v3218
  %4184 = vmatpush.msra.mxu0 %v3210
  %4185 = vmatpush.msra.mxu0 %v3202
  %4186 = vmatpush.msra.mxu0 %v3194
  %4187 = vmatpush.msra.mxu0 %v3186
  %4188 = vmatmul.f32.gmra.mxu0 %v3167
  %v4189 = vpop.f32.mrf.mxu0
  %v4190 = vadd.f32 0.0, %v4189
  %4191 = vdwg.mxu0
  %4192 = vmatpush.msra.mxu0 %v3434
  %4193 = vmatpush.msra.mxu0 %v3426
  %4194 = vmatpush.msra.mxu0 %v3418
  %4195 = vmatpush.msra.mxu0 %v3410
  %4196 = vmatpush.msra.mxu0 %v3402
  %4197 = vmatpush.msra.mxu0 %v3394
  %4198 = vmatpush.msra.mxu0 %v3386
  %4199 = vmatpush.msra.mxu0 %v3378
  %4200 = vmatpush.msra.mxu0 %v3370
  %4201 = vmatpush.msra.mxu0 %v3362
  %4202 = vmatpush.msra.mxu0 %v3354
  %4203 = vmatpush.msra.mxu0 %v3346
  %4204 = vmatpush.msra.mxu0 %v3338
  %4205 = vmatpush.msra.mxu0 %v3330
  %4206 = vmatpush.msra.mxu0 %v3322
  %4207 = vmatpush.msra.mxu0 %v3314
  %4208 = vmatmul.f32.gmra.mxu0 %v3168
  %v4209 = vpop.f32.mrf.mxu0
  %v4210 = vadd.f32 %v4190, %v4209
  %4211 = vdwg.mxu0
  %4212 = vmatpush.msra.mxu0 %v3562
  %4213 = vmatpush.msra.mxu0 %v3554
  %4214 = vmatpush.msra.mxu0 %v3546
  %4215 = vmatpush.msra.mxu0 %v3538
  %4216 = vmatpush.msra.mxu0 %v3530
  %4217 = vmatpush.msra.mxu0 %v3522
  %4218 = vmatpush.msra.mxu0 %v3514
  %4219 = vmatpush.msra.mxu0 %v3506
  %4220 = vmatpush.msra.mxu0 %v3498
  %4221 = vmatpush.msra.mxu0 %v3490
  %4222 = vmatpush.msra.mxu0 %v3482
  %4223 = vmatpush.msra.mxu0 %v3474
  %4224 = vmatpush.msra.mxu0 %v3466
  %4225 = vmatpush.msra.mxu0 %v3458
  %4226 = vmatpush.msra.mxu0 %v3450
  %4227 = vmatpush.msra.mxu0 %v3442
  %4228 = vmatmul.f32.gmra.mxu0 %v3169
  %v4229 = vpop.f32.mrf.mxu0
  %v4230 = vadd.f32 %v4210, %v4229
  %4231 = vdwg.mxu0
  %4232 = vmatpush.msra.mxu0 %v3690
  %4233 = vmatpush.msra.mxu0 %v3682
  %4234 = vmatpush.msra.mxu0 %v3674
  %4235 = vmatpush.msra.mxu0 %v3666
  %4236 = vmatpush.msra.mxu0 %v3658
  %4237 = vmatpush.msra.mxu0 %v3650
  %4238 = vmatpush.msra.mxu0 %v3642
  %4239 = vmatpush.msra.mxu0 %v3634
  %4240 = vmatpush.msra.mxu0 %v3626
  %4241 = vmatpush.msra.mxu0 %v3618
  %4242 = vmatpush.msra.mxu0 %v3610
  %4243 = vmatpush.msra.mxu0 %v3602
  %4244 = vmatpush.msra.mxu0 %v3594
  %4245 = vmatpush.msra.mxu0 %v3586
  %4246 = vmatpush.msra.mxu0 %v3578
  %4247 = vmatpush.msra.mxu0 %v3570
  %4248 = vmatmul.f32.gmra.mxu0 %v3170
  %v4249 = vpop.f32.mrf.mxu0
  %v4250 = vadd.f32 %v4230, %v4249
  %4251 = vdwg.mxu0
  %4252 = vmatpush.msra.mxu0 %v3307
  %4253 = vmatpush.msra.mxu0 %v3299
  %4254 = vmatpush.msra.mxu0 %v3291
  %4255 = vmatpush.msra.mxu0 %v3283
  %4256 = vmatpush.msra.mxu0 %v3275
  %4257 = vmatpush.msra.mxu0 %v3267
  %4258 = vmatpush.msra.mxu0 %v3259
  %4259 = vmatpush.msra.mxu0 %v3251
  %4260 = vmatpush.msra.mxu0 %v3243
  %4261 = vmatpush.msra.mxu0 %v3235
  %4262 = vmatpush.msra.mxu0 %v3227
  %4263 = vmatpush.msra.mxu0 %v3219
  %4264 = vmatpush.msra.mxu0 %v3211
  %4265 = vmatpush.msra.mxu0 %v3203
  %4266 = vmatpush.msra.mxu0 %v3195
  %4267 = vmatpush.msra.mxu0 %v3187
  %4268 = vmatmul.f32.gmra.mxu0 %v3167
  %v4269 = vpop.f32.mrf.mxu0
  %v4270 = vadd.f32 0.0, %v4269
  %4271 = vdwg.mxu0
  %4272 = vmatpush.msra.mxu0 %v3435
  %4273 = vmatpush.msra.mxu0 %v3427
  %4274 = vmatpush.msra.mxu0 %v3419
  %4275 = vmatpush.msra.mxu0 %v3411
  %4276 = vmatpush.msra.mxu0 %v3403
  %4277 = vmatpush.msra.mxu0 %v3395
  %4278 = vmatpush.msra.mxu0 %v3387
  %4279 = vmatpush.msra.mxu0 %v3379
  %4280 = vmatpush.msra.mxu0 %v3371
  %4281 = vmatpush.msra.mxu0 %v3363
  %4282 = vmatpush.msra.mxu0 %v3355
  %4283 = vmatpush.msra.mxu0 %v3347
  %4284 = vmatpush.msra.mxu0 %v3339
  %4285 = vmatpush.msra.mxu0 %v3331
  %4286 = vmatpush.msra.mxu0 %v3323
  %4287 = vmatpush.msra.mxu0 %v3315
  %4288 = vmatmul.f32.gmra.mxu0 %v3168
  %v4289 = vpop.f32.mrf.mxu0
  %v4290 = vadd.f32 %v4270, %v4289
  %4291 = vdwg.mxu0
  %4292 = vmatpush.msra.mxu0 %v3563
  %4293 = vmatpush.msra.mxu0 %v3555
  %4294 = vmatpush.msra.mxu0 %v3547
  %4295 = vmatpush.msra.mxu0 %v3539
  %4296 = vmatpush.msra.mxu0 %v3531
  %4297 = vmatpush.msra.mxu0 %v3523
  %4298 = vmatpush.msra.mxu0 %v3515
  %4299 = vmatpush.msra.mxu0 %v3507
  %4300 = vmatpush.msra.mxu0 %v3499
  %4301 = vmatpush.msra.mxu0 %v3491
  %4302 = vmatpush.msra.mxu0 %v3483
  %4303 = vmatpush.msra.mxu0 %v3475
  %4304 = vmatpush.msra.mxu0 %v3467
  %4305 = vmatpush.msra.mxu0 %v3459
  %4306 = vmatpush.msra.mxu0 %v3451
  %4307 = vmatpush.msra.mxu0 %v3443
  %4308 = vmatmul.f32.gmra.mxu0 %v3169
  %v4309 = vpop.f32.mrf.mxu0
  %v4310 = vadd.f32 %v4290, %v4309
  %4311 = vdwg.mxu0
  %4312 = vmatpush.msra.mxu0 %v3691
  %4313 = vmatpush.msra.mxu0 %v3683
  %4314 = vmatpush.msra.mxu0 %v3675
  %4315 = vmatpush.msra.mxu0 %v3667
  %4316 = vmatpush.msra.mxu0 %v3659
  %4317 = vmatpush.msra.mxu0 %v3651
  %4318 = vmatpush.msra.mxu0 %v3643
  %4319 = vmatpush.msra.mxu0 %v3635
  %4320 = vmatpush.msra.mxu0 %v3627
  %4321 = vmatpush.msra.mxu0 %v3619
  %4322 = vmatpush.msra.mxu0 %v3611
  %4323 = vmatpush.msra.mxu0 %v3603
  %4324 = vmatpush.msra.mxu0 %v3595
  %4325 = vmatpush.msra.mxu0 %v3587
  %4326 = vmatpush.msra.mxu0 %v3579
  %4327 = vmatpush.msra.mxu0 %v3571
  %4328 = vmatmul.f32.gmra.mxu0 %v3170
  %v4329 = vpop.f32.mrf.mxu0
  %v4330 = vadd.f32 %v4310, %v4329
  %4331 = vdwg.mxu0
  %v4332 = vadd.f32 %v3172, %v3770
  %v4333 = vadd.f32 %v3173, %v3850
  %v4334 = vadd.f32 %v3174, %v3930
  %v4335 = vadd.f32 %v3175, %v4010
  %v4336 = vadd.f32 %v3176, %v4090
  %v4337 = vadd.f32 %v3177, %v4170
  %v4338 = vadd.f32 %v3178, %v4250
  %v4339 = vadd.f32 %v3179, %v4330
  %v4340 = vxor.u32 %v4332, 2147483648
  %v4341 = vxor.u32 %v4333, 2147483648
  %v4342 = vxor.u32 %v4334, 2147483648
  %v4343 = vxor.u32 %v4335, 2147483648
  %v4344 = vxor.u32 %v4336, 2147483648
  %v4345 = vxor.u32 %v4337, 2147483648
  %v4346 = vmul.f32 %v4340, 1.442695
  %v4347 = vpow.pop %v4346
  %v4348 = vmul.f32 %v4341, 1.442695
  %v4349 = vpow.pop %v4348
  %v4350 = vmul.f32 %v4342, 1.442695
  %v4351 = vpow.pop %v4350
  %v4352 = vmul.f32 %v4343, 1.442695
  %v4353 = vpow.pop %v4352
  %v4354 = vmul.f32 %v4344, 1.442695
  %v4355 = vpow.pop %v4354
  %v4356 = vmul.f32 %v4345, 1.442695
  %v4357 = vpow.pop %v4356
  %v4358 = vadd.f32 %v4347, 1.0
  %v4359 = vadd.f32 %v4349, 1.0
  %v4360 = vadd.f32 %v4351, 1.0
  %v4361 = vadd.f32 %v4353, 1.0
  %v4362 = vadd.f32 %v4355, 1.0
  %v4363 = vadd.f32 %v4357, 1.0
  %v4364 = vrcp.pop %v4358
  %v4365 = vmul.f32 %v4358, %v4364
  %v4366 = vsub.f32 1.0, %v4365
  %v4367 = vmul.f32 %v4364, %v4366
  %v4368 = vadd.f32 %v4364, %v4367
  %vm4369 = vweird.f32 %v4358
  %vm4370 = vweird.f32 %v4364
  %vm4371 = vmor %vm4369, %vm4370
  %v4372 = vsel %vm4371, %v4364, %v4368
  %v4373 = vand.u32 2147483647, %v4358
  %vm4374 = vcmp.eq.f32.partialorder %v4373, 8.507059e+37
  %v4375 = vand.u32 %v4358, 2147483648
  %v4376 = vor.u32 1.1754944e-38, %v4375
  %v4377 = vsel %vm4374, %v4376, %v4372
  %v4378 = vmul.f32 1.0, %v4377
  %v4379 = vrcp.pop %v4359
  %v4380 = vmul.f32 %v4359, %v4379
  %v4381 = vsub.f32 1.0, %v4380
  %v4382 = vmul.f32 %v4379, %v4381
  %v4383 = vadd.f32 %v4379, %v4382
  %vm4384 = vweird.f32 %v4359
  %vm4385 = vweird.f32 %v4379
  %vm4386 = vmor %vm4384, %vm4385
  %v4387 = vsel %vm4386, %v4379, %v4383
  %v4388 = vand.u32 2147483647, %v4359
  %vm4389 = vcmp.eq.f32.partialorder %v4388, 8.507059e+37
  %v4390 = vand.u32 %v4359, 2147483648
  %v4391 = vor.u32 1.1754944e-38, %v4390
  %v4392 = vsel %vm4389, %v4391, %v4387
  %v4393 = vmul.f32 1.0, %v4392
  %v4394 = vrcp.pop %v4360
  %v4395 = vmul.f32 %v4360, %v4394
  %v4396 = vsub.f32 1.0, %v4395
  %v4397 = vmul.f32 %v4394, %v4396
  %v4398 = vadd.f32 %v4394, %v4397
  %vm4399 = vweird.f32 %v4360
  %vm4400 = vweird.f32 %v4394
  %vm4401 = vmor %vm4399, %vm4400
  %v4402 = vsel %vm4401, %v4394, %v4398
  %v4403 = vand.u32 2147483647, %v4360
  %vm4404 = vcmp.eq.f32.partialorder %v4403, 8.507059e+37
  %v4405 = vand.u32 %v4360, 2147483648
  %v4406 = vor.u32 1.1754944e-38, %v4405
  %v4407 = vsel %vm4404, %v4406, %v4402
  %v4408 = vmul.f32 1.0, %v4407
  %v4409 = vrcp.pop %v4361
  %v4410 = vmul.f32 %v4361, %v4409
  %v4411 = vsub.f32 1.0, %v4410
  %v4412 = vmul.f32 %v4409, %v4411
  %v4413 = vadd.f32 %v4409, %v4412
  %vm4414 = vweird.f32 %v4361
  %vm4415 = vweird.f32 %v4409
  %vm4416 = vmor %vm4414, %vm4415
  %v4417 = vsel %vm4416, %v4409, %v4413
  %v4418 = vand.u32 2147483647, %v4361
  %vm4419 = vcmp.eq.f32.partialorder %v4418, 8.507059e+37
  %v4420 = vand.u32 %v4361, 2147483648
  %v4421 = vor.u32 1.1754944e-38, %v4420
  %v4422 = vsel %vm4419, %v4421, %v4417
  %v4423 = vmul.f32 1.0, %v4422
  %v4424 = vrcp.pop %v4362
  %v4425 = vmul.f32 %v4362, %v4424
  %v4426 = vsub.f32 1.0, %v4425
  %v4427 = vmul.f32 %v4424, %v4426
  %v4428 = vadd.f32 %v4424, %v4427
  %vm4429 = vweird.f32 %v4362
  %vm4430 = vweird.f32 %v4424
  %vm4431 = vmor %vm4429, %vm4430
  %v4432 = vsel %vm4431, %v4424, %v4428
  %v4433 = vand.u32 2147483647, %v4362
  %vm4434 = vcmp.eq.f32.partialorder %v4433, 8.507059e+37
  %v4435 = vand.u32 %v4362, 2147483648
  %v4436 = vor.u32 1.1754944e-38, %v4435
  %v4437 = vsel %vm4434, %v4436, %v4432
  %v4438 = vmul.f32 1.0, %v4437
  %v4439 = vrcp.pop %v4363
  %v4440 = vmul.f32 %v4363, %v4439
  %v4441 = vsub.f32 1.0, %v4440
  %v4442 = vmul.f32 %v4439, %v4441
  %v4443 = vadd.f32 %v4439, %v4442
  %vm4444 = vweird.f32 %v4363
  %vm4445 = vweird.f32 %v4439
  %vm4446 = vmor %vm4444, %vm4445
  %v4447 = vsel %vm4446, %v4439, %v4443
  %v4448 = vand.u32 2147483647, %v4363
  %vm4449 = vcmp.eq.f32.partialorder %v4448, 8.507059e+37
  %v4450 = vand.u32 %v4363, 2147483648
  %v4451 = vor.u32 1.1754944e-38, %v4450
  %v4452 = vsel %vm4449, %v4451, %v4447
  %v4453 = vmul.f32 1.0, %v4452
  %v4454 = vtanh.pop %v4338
  %v4455 = vtanh.pop %v4339
  %v4456 = vmul.f32 %v4408, %v3155
  %v4457 = vmul.f32 %v4423, %v3156
  %v4458 = vmul.f32 %v4378, %v4454
  %v4459 = vmul.f32 %v4393, %v4455
  %v4460 = vadd.f32 %v4456, %v4458
  %v4461 = vadd.f32 %v4457, %v4459
  %v4462 = vtanh.pop %v4460
  %v4463 = vtanh.pop %v4461
  %v4464 = vmul.f32 %v4438, %v4462
  %v4465 = vmul.f32 %v4453, %v4463
  %s4466 = scalar_lea.vmem [#allocation3], 32
  %4467 = vst [vmem:[%s4466] sm:$0xff] %v4464
  %4468 = vst [vmem:[%s4466 + $0x8] sm:$0xff] %v4465
  %s4469 = scalar_lea.vmem [#allocation4], 80
  %4470 = vst [vmem:[%s4469] sm:$0xff] %v4464
  %4471 = vst [vmem:[%s4469 + $0x8] sm:$0xff] %v4465
  %v4472 = vmul.f32 %v4464, %v555
  %v4473 = vmul.f32 %v4465, %v555
  %v4474 = vmul.f32 %v4464, %v560
  %v4475 = vmul.f32 %v4465, %v560
  %s4476 = scalar_lea.vmem [#allocation2], 192
  %v4477 = vld [vmem:[%s4476] sm:$0xff]
  %v4478 = vld [vmem:[%s4476 + $0x8] sm:$0xff]
  %v4479 = vld [vmem:[%s4476 + $0x10] sm:$0xff]
  %v4480 = vld [vmem:[%s4476 + $0x18] sm:$0xff]
  %v4481 = vld [vmem:[%s4476 + $0x20] sm:$0xff]
  %v4482 = vld [vmem:[%s4476 + $0x28] sm:$0xff]
  %v4483 = vld [vmem:[%s4476 + $0x30] sm:$0xff]
  %v4484 = vld [vmem:[%s4476 + $0x38] sm:$0xff]
  %v4485 = vld [vmem:[%s2] sm:$0xff]
  %v4486 = vld [vmem:[%s2 + $0x8] sm:$0xff]
  %v4487 = vld [vmem:[%s2 + $0x10] sm:$0xff]
  %v4488 = vld [vmem:[%s2 + $0x18] sm:$0xff]
  %v4489 = vld [vmem:[%s2 + $0x20] sm:$0xff]
  %v4490 = vld [vmem:[%s2 + $0x28] sm:$0xff]
  %v4491 = vld [vmem:[%s2 + $0x30] sm:$0xff]
  %v4492 = vld [vmem:[%s2 + $0x38] sm:$0xff]
  %v4493 = vld [vmem:[%s2 + $0x40] sm:$0xff]
  %v4494 = vld [vmem:[%s2 + $0x48] sm:$0xff]
  %v4495 = vld [vmem:[%s2 + $0x50] sm:$0xff]
  %v4496 = vld [vmem:[%s2 + $0x58] sm:$0xff]
  %v4497 = vld [vmem:[%s2 + $0x60] sm:$0xff]
  %v4498 = vld [vmem:[%s2 + $0x68] sm:$0xff]
  %v4499 = vld [vmem:[%s2 + $0x70] sm:$0xff]
  %v4500 = vld [vmem:[%s2 + $0x78] sm:$0xff]
  %v4501 = vld [vmem:[%s2 + $0x80] sm:$0xff]
  %v4502 = vld [vmem:[%s2 + $0x88] sm:$0xff]
  %v4503 = vld [vmem:[%s2 + $0x90] sm:$0xff]
  %v4504 = vld [vmem:[%s2 + $0x98] sm:$0xff]
  %v4505 = vld [vmem:[%s2 + $0xa0] sm:$0xff]
  %v4506 = vld [vmem:[%s2 + $0xa8] sm:$0xff]
  %v4507 = vld [vmem:[%s2 + $0xb0] sm:$0xff]
  %v4508 = vld [vmem:[%s2 + $0xb8] sm:$0xff]
  %v4509 = vld [vmem:[%s2 + $0xc0] sm:$0xff]
  %v4510 = vld [vmem:[%s2 + $0xc8] sm:$0xff]
  %v4511 = vld [vmem:[%s2 + $0xd0] sm:$0xff]
  %v4512 = vld [vmem:[%s2 + $0xd8] sm:$0xff]
  %v4513 = vld [vmem:[%s2 + $0xe0] sm:$0xff]
  %v4514 = vld [vmem:[%s2 + $0xe8] sm:$0xff]
  %v4515 = vld [vmem:[%s2 + $0xf0] sm:$0xff]
  %v4516 = vld [vmem:[%s2 + $0xf8] sm:$0xff]
  %v4517 = vld [vmem:[%s2 + $0x100] sm:$0xff]
  %v4518 = vld [vmem:[%s2 + $0x108] sm:$0xff]
  %v4519 = vld [vmem:[%s2 + $0x110] sm:$0xff]
  %v4520 = vld [vmem:[%s2 + $0x118] sm:$0xff]
  %v4521 = vld [vmem:[%s2 + $0x120] sm:$0xff]
  %v4522 = vld [vmem:[%s2 + $0x128] sm:$0xff]
  %v4523 = vld [vmem:[%s2 + $0x130] sm:$0xff]
  %v4524 = vld [vmem:[%s2 + $0x138] sm:$0xff]
  %v4525 = vld [vmem:[%s2 + $0x140] sm:$0xff]
  %v4526 = vld [vmem:[%s2 + $0x148] sm:$0xff]
  %v4527 = vld [vmem:[%s2 + $0x150] sm:$0xff]
  %v4528 = vld [vmem:[%s2 + $0x158] sm:$0xff]
  %v4529 = vld [vmem:[%s2 + $0x160] sm:$0xff]
  %v4530 = vld [vmem:[%s2 + $0x168] sm:$0xff]
  %v4531 = vld [vmem:[%s2 + $0x170] sm:$0xff]
  %v4532 = vld [vmem:[%s2 + $0x178] sm:$0xff]
  %v4533 = vld [vmem:[%s2 + $0x180] sm:$0xff]
  %v4534 = vld [vmem:[%s2 + $0x188] sm:$0xff]
  %v4535 = vld [vmem:[%s2 + $0x190] sm:$0xff]
  %v4536 = vld [vmem:[%s2 + $0x198] sm:$0xff]
  %v4537 = vld [vmem:[%s2 + $0x1a0] sm:$0xff]
  %v4538 = vld [vmem:[%s2 + $0x1a8] sm:$0xff]
  %v4539 = vld [vmem:[%s2 + $0x1b0] sm:$0xff]
  %v4540 = vld [vmem:[%s2 + $0x1b8] sm:$0xff]
  %v4541 = vld [vmem:[%s2 + $0x1c0] sm:$0xff]
  %v4542 = vld [vmem:[%s2 + $0x1c8] sm:$0xff]
  %v4543 = vld [vmem:[%s2 + $0x1d0] sm:$0xff]
  %v4544 = vld [vmem:[%s2 + $0x1d8] sm:$0xff]
  %v4545 = vld [vmem:[%s2 + $0x1e0] sm:$0xff]
  %v4546 = vld [vmem:[%s2 + $0x1e8] sm:$0xff]
  %v4547 = vld [vmem:[%s2 + $0x1f0] sm:$0xff]
  %v4548 = vld [vmem:[%s2 + $0x1f8] sm:$0xff]
  %v4549 = vld [vmem:[%s2 + $0x200] sm:$0xff]
  %v4550 = vld [vmem:[%s2 + $0x208] sm:$0xff]
  %v4551 = vld [vmem:[%s2 + $0x210] sm:$0xff]
  %v4552 = vld [vmem:[%s2 + $0x218] sm:$0xff]
  %v4553 = vld [vmem:[%s2 + $0x220] sm:$0xff]
  %v4554 = vld [vmem:[%s2 + $0x228] sm:$0xff]
  %v4555 = vld [vmem:[%s2 + $0x230] sm:$0xff]
  %v4556 = vld [vmem:[%s2 + $0x238] sm:$0xff]
  %v4557 = vld [vmem:[%s2 + $0x240] sm:$0xff]
  %v4558 = vld [vmem:[%s2 + $0x248] sm:$0xff]
  %v4559 = vld [vmem:[%s2 + $0x250] sm:$0xff]
  %v4560 = vld [vmem:[%s2 + $0x258] sm:$0xff]
  %v4561 = vld [vmem:[%s2 + $0x260] sm:$0xff]
  %v4562 = vld [vmem:[%s2 + $0x268] sm:$0xff]
  %v4563 = vld [vmem:[%s2 + $0x270] sm:$0xff]
  %v4564 = vld [vmem:[%s2 + $0x278] sm:$0xff]
  %v4565 = vld [vmem:[%s2 + $0x280] sm:$0xff]
  %v4566 = vld [vmem:[%s2 + $0x288] sm:$0xff]
  %v4567 = vld [vmem:[%s2 + $0x290] sm:$0xff]
  %v4568 = vld [vmem:[%s2 + $0x298] sm:$0xff]
  %v4569 = vld [vmem:[%s2 + $0x2a0] sm:$0xff]
  %v4570 = vld [vmem:[%s2 + $0x2a8] sm:$0xff]
  %v4571 = vld [vmem:[%s2 + $0x2b0] sm:$0xff]
  %v4572 = vld [vmem:[%s2 + $0x2b8] sm:$0xff]
  %v4573 = vld [vmem:[%s2 + $0x2c0] sm:$0xff]
  %v4574 = vld [vmem:[%s2 + $0x2c8] sm:$0xff]
  %v4575 = vld [vmem:[%s2 + $0x2d0] sm:$0xff]
  %v4576 = vld [vmem:[%s2 + $0x2d8] sm:$0xff]
  %v4577 = vld [vmem:[%s2 + $0x2e0] sm:$0xff]
  %v4578 = vld [vmem:[%s2 + $0x2e8] sm:$0xff]
  %v4579 = vld [vmem:[%s2 + $0x2f0] sm:$0xff]
  %v4580 = vld [vmem:[%s2 + $0x2f8] sm:$0xff]
  %v4581 = vld [vmem:[%s2 + $0x300] sm:$0xff]
  %v4582 = vld [vmem:[%s2 + $0x308] sm:$0xff]
  %v4583 = vld [vmem:[%s2 + $0x310] sm:$0xff]
  %v4584 = vld [vmem:[%s2 + $0x318] sm:$0xff]
  %v4585 = vld [vmem:[%s2 + $0x320] sm:$0xff]
  %v4586 = vld [vmem:[%s2 + $0x328] sm:$0xff]
  %v4587 = vld [vmem:[%s2 + $0x330] sm:$0xff]
  %v4588 = vld [vmem:[%s2 + $0x338] sm:$0xff]
  %v4589 = vld [vmem:[%s2 + $0x340] sm:$0xff]
  %v4590 = vld [vmem:[%s2 + $0x348] sm:$0xff]
  %v4591 = vld [vmem:[%s2 + $0x350] sm:$0xff]
  %v4592 = vld [vmem:[%s2 + $0x358] sm:$0xff]
  %v4593 = vld [vmem:[%s2 + $0x360] sm:$0xff]
  %v4594 = vld [vmem:[%s2 + $0x368] sm:$0xff]
  %v4595 = vld [vmem:[%s2 + $0x370] sm:$0xff]
  %v4596 = vld [vmem:[%s2 + $0x378] sm:$0xff]
  %v4597 = vld [vmem:[%s2 + $0x380] sm:$0xff]
  %v4598 = vld [vmem:[%s2 + $0x388] sm:$0xff]
  %v4599 = vld [vmem:[%s2 + $0x390] sm:$0xff]
  %v4600 = vld [vmem:[%s2 + $0x398] sm:$0xff]
  %v4601 = vld [vmem:[%s2 + $0x3a0] sm:$0xff]
  %v4602 = vld [vmem:[%s2 + $0x3a8] sm:$0xff]
  %v4603 = vld [vmem:[%s2 + $0x3b0] sm:$0xff]
  %v4604 = vld [vmem:[%s2 + $0x3b8] sm:$0xff]
  %v4605 = vld [vmem:[%s2 + $0x3c0] sm:$0xff]
  %v4606 = vld [vmem:[%s2 + $0x3c8] sm:$0xff]
  %v4607 = vld [vmem:[%s2 + $0x3d0] sm:$0xff]
  %v4608 = vld [vmem:[%s2 + $0x3d8] sm:$0xff]
  %v4609 = vld [vmem:[%s2 + $0x3e0] sm:$0xff]
  %v4610 = vld [vmem:[%s2 + $0x3e8] sm:$0xff]
  %v4611 = vld [vmem:[%s2 + $0x3f0] sm:$0xff]
  %v4612 = vld [vmem:[%s2 + $0x3f8] sm:$0xff]
  %v4613 = vld [vmem:[%s2 + $0x400] sm:$0xff]
  %v4614 = vld [vmem:[%s2 + $0x408] sm:$0xff]
  %v4615 = vld [vmem:[%s2 + $0x410] sm:$0xff]
  %v4616 = vld [vmem:[%s2 + $0x418] sm:$0xff]
  %v4617 = vld [vmem:[%s2 + $0x420] sm:$0xff]
  %v4618 = vld [vmem:[%s2 + $0x428] sm:$0xff]
  %v4619 = vld [vmem:[%s2 + $0x430] sm:$0xff]
  %v4620 = vld [vmem:[%s2 + $0x438] sm:$0xff]
  %v4621 = vld [vmem:[%s2 + $0x440] sm:$0xff]
  %v4622 = vld [vmem:[%s2 + $0x448] sm:$0xff]
  %v4623 = vld [vmem:[%s2 + $0x450] sm:$0xff]
  %v4624 = vld [vmem:[%s2 + $0x458] sm:$0xff]
  %v4625 = vld [vmem:[%s2 + $0x460] sm:$0xff]
  %v4626 = vld [vmem:[%s2 + $0x468] sm:$0xff]
  %v4627 = vld [vmem:[%s2 + $0x470] sm:$0xff]
  %v4628 = vld [vmem:[%s2 + $0x478] sm:$0xff]
  %v4629 = vld [vmem:[%s2 + $0x480] sm:$0xff]
  %v4630 = vld [vmem:[%s2 + $0x488] sm:$0xff]
  %v4631 = vld [vmem:[%s2 + $0x490] sm:$0xff]
  %v4632 = vld [vmem:[%s2 + $0x498] sm:$0xff]
  %v4633 = vld [vmem:[%s2 + $0x4a0] sm:$0xff]
  %v4634 = vld [vmem:[%s2 + $0x4a8] sm:$0xff]
  %v4635 = vld [vmem:[%s2 + $0x4b0] sm:$0xff]
  %v4636 = vld [vmem:[%s2 + $0x4b8] sm:$0xff]
  %v4637 = vld [vmem:[%s2 + $0x4c0] sm:$0xff]
  %v4638 = vld [vmem:[%s2 + $0x4c8] sm:$0xff]
  %v4639 = vld [vmem:[%s2 + $0x4d0] sm:$0xff]
  %v4640 = vld [vmem:[%s2 + $0x4d8] sm:$0xff]
  %v4641 = vld [vmem:[%s2 + $0x4e0] sm:$0xff]
  %v4642 = vld [vmem:[%s2 + $0x4e8] sm:$0xff]
  %v4643 = vld [vmem:[%s2 + $0x4f0] sm:$0xff]
  %v4644 = vld [vmem:[%s2 + $0x4f8] sm:$0xff]
  %v4645 = vld [vmem:[%s2 + $0x500] sm:$0xff]
  %v4646 = vld [vmem:[%s2 + $0x508] sm:$0xff]
  %v4647 = vld [vmem:[%s2 + $0x510] sm:$0xff]
  %v4648 = vld [vmem:[%s2 + $0x518] sm:$0xff]
  %v4649 = vld [vmem:[%s2 + $0x520] sm:$0xff]
  %v4650 = vld [vmem:[%s2 + $0x528] sm:$0xff]
  %v4651 = vld [vmem:[%s2 + $0x530] sm:$0xff]
  %v4652 = vld [vmem:[%s2 + $0x538] sm:$0xff]
  %v4653 = vld [vmem:[%s2 + $0x540] sm:$0xff]
  %v4654 = vld [vmem:[%s2 + $0x548] sm:$0xff]
  %v4655 = vld [vmem:[%s2 + $0x550] sm:$0xff]
  %v4656 = vld [vmem:[%s2 + $0x558] sm:$0xff]
  %v4657 = vld [vmem:[%s2 + $0x560] sm:$0xff]
  %v4658 = vld [vmem:[%s2 + $0x568] sm:$0xff]
  %v4659 = vld [vmem:[%s2 + $0x570] sm:$0xff]
  %v4660 = vld [vmem:[%s2 + $0x578] sm:$0xff]
  %v4661 = vld [vmem:[%s2 + $0x580] sm:$0xff]
  %v4662 = vld [vmem:[%s2 + $0x588] sm:$0xff]
  %v4663 = vld [vmem:[%s2 + $0x590] sm:$0xff]
  %v4664 = vld [vmem:[%s2 + $0x598] sm:$0xff]
  %v4665 = vld [vmem:[%s2 + $0x5a0] sm:$0xff]
  %v4666 = vld [vmem:[%s2 + $0x5a8] sm:$0xff]
  %v4667 = vld [vmem:[%s2 + $0x5b0] sm:$0xff]
  %v4668 = vld [vmem:[%s2 + $0x5b8] sm:$0xff]
  %v4669 = vld [vmem:[%s2 + $0x5c0] sm:$0xff]
  %v4670 = vld [vmem:[%s2 + $0x5c8] sm:$0xff]
  %v4671 = vld [vmem:[%s2 + $0x5d0] sm:$0xff]
  %v4672 = vld [vmem:[%s2 + $0x5d8] sm:$0xff]
  %v4673 = vld [vmem:[%s2 + $0x5e0] sm:$0xff]
  %v4674 = vld [vmem:[%s2 + $0x5e8] sm:$0xff]
  %v4675 = vld [vmem:[%s2 + $0x5f0] sm:$0xff]
  %v4676 = vld [vmem:[%s2 + $0x5f8] sm:$0xff]
  %v4677 = vld [vmem:[%s2 + $0x600] sm:$0xff]
  %v4678 = vld [vmem:[%s2 + $0x608] sm:$0xff]
  %v4679 = vld [vmem:[%s2 + $0x610] sm:$0xff]
  %v4680 = vld [vmem:[%s2 + $0x618] sm:$0xff]
  %v4681 = vld [vmem:[%s2 + $0x620] sm:$0xff]
  %v4682 = vld [vmem:[%s2 + $0x628] sm:$0xff]
  %v4683 = vld [vmem:[%s2 + $0x630] sm:$0xff]
  %v4684 = vld [vmem:[%s2 + $0x638] sm:$0xff]
  %v4685 = vld [vmem:[%s2 + $0x640] sm:$0xff]
  %v4686 = vld [vmem:[%s2 + $0x648] sm:$0xff]
  %v4687 = vld [vmem:[%s2 + $0x650] sm:$0xff]
  %v4688 = vld [vmem:[%s2 + $0x658] sm:$0xff]
  %v4689 = vld [vmem:[%s2 + $0x660] sm:$0xff]
  %v4690 = vld [vmem:[%s2 + $0x668] sm:$0xff]
  %v4691 = vld [vmem:[%s2 + $0x670] sm:$0xff]
  %v4692 = vld [vmem:[%s2 + $0x678] sm:$0xff]
  %v4693 = vld [vmem:[%s2 + $0x680] sm:$0xff]
  %v4694 = vld [vmem:[%s2 + $0x688] sm:$0xff]
  %v4695 = vld [vmem:[%s2 + $0x690] sm:$0xff]
  %v4696 = vld [vmem:[%s2 + $0x698] sm:$0xff]
  %v4697 = vld [vmem:[%s2 + $0x6a0] sm:$0xff]
  %v4698 = vld [vmem:[%s2 + $0x6a8] sm:$0xff]
  %v4699 = vld [vmem:[%s2 + $0x6b0] sm:$0xff]
  %v4700 = vld [vmem:[%s2 + $0x6b8] sm:$0xff]
  %v4701 = vld [vmem:[%s2 + $0x6c0] sm:$0xff]
  %v4702 = vld [vmem:[%s2 + $0x6c8] sm:$0xff]
  %v4703 = vld [vmem:[%s2 + $0x6d0] sm:$0xff]
  %v4704 = vld [vmem:[%s2 + $0x6d8] sm:$0xff]
  %v4705 = vld [vmem:[%s2 + $0x6e0] sm:$0xff]
  %v4706 = vld [vmem:[%s2 + $0x6e8] sm:$0xff]
  %v4707 = vld [vmem:[%s2 + $0x6f0] sm:$0xff]
  %v4708 = vld [vmem:[%s2 + $0x6f8] sm:$0xff]
  %v4709 = vld [vmem:[%s2 + $0x700] sm:$0xff]
  %v4710 = vld [vmem:[%s2 + $0x708] sm:$0xff]
  %v4711 = vld [vmem:[%s2 + $0x710] sm:$0xff]
  %v4712 = vld [vmem:[%s2 + $0x718] sm:$0xff]
  %v4713 = vld [vmem:[%s2 + $0x720] sm:$0xff]
  %v4714 = vld [vmem:[%s2 + $0x728] sm:$0xff]
  %v4715 = vld [vmem:[%s2 + $0x730] sm:$0xff]
  %v4716 = vld [vmem:[%s2 + $0x738] sm:$0xff]
  %v4717 = vld [vmem:[%s2 + $0x740] sm:$0xff]
  %v4718 = vld [vmem:[%s2 + $0x748] sm:$0xff]
  %v4719 = vld [vmem:[%s2 + $0x750] sm:$0xff]
  %v4720 = vld [vmem:[%s2 + $0x758] sm:$0xff]
  %v4721 = vld [vmem:[%s2 + $0x760] sm:$0xff]
  %v4722 = vld [vmem:[%s2 + $0x768] sm:$0xff]
  %v4723 = vld [vmem:[%s2 + $0x770] sm:$0xff]
  %v4724 = vld [vmem:[%s2 + $0x778] sm:$0xff]
  %v4725 = vld [vmem:[%s2 + $0x780] sm:$0xff]
  %v4726 = vld [vmem:[%s2 + $0x788] sm:$0xff]
  %v4727 = vld [vmem:[%s2 + $0x790] sm:$0xff]
  %v4728 = vld [vmem:[%s2 + $0x798] sm:$0xff]
  %v4729 = vld [vmem:[%s2 + $0x7a0] sm:$0xff]
  %v4730 = vld [vmem:[%s2 + $0x7a8] sm:$0xff]
  %v4731 = vld [vmem:[%s2 + $0x7b0] sm:$0xff]
  %v4732 = vld [vmem:[%s2 + $0x7b8] sm:$0xff]
  %v4733 = vld [vmem:[%s2 + $0x7c0] sm:$0xff]
  %v4734 = vld [vmem:[%s2 + $0x7c8] sm:$0xff]
  %v4735 = vld [vmem:[%s2 + $0x7d0] sm:$0xff]
  %v4736 = vld [vmem:[%s2 + $0x7d8] sm:$0xff]
  %v4737 = vld [vmem:[%s2 + $0x7e0] sm:$0xff]
  %v4738 = vld [vmem:[%s2 + $0x7e8] sm:$0xff]
  %v4739 = vld [vmem:[%s2 + $0x7f0] sm:$0xff]
  %v4740 = vld [vmem:[%s2 + $0x7f8] sm:$0xff]
  %v4741 = vld [vmem:[%s2 + $0x800] sm:$0xff]
  %v4742 = vld [vmem:[%s2 + $0x808] sm:$0xff]
  %v4743 = vld [vmem:[%s2 + $0x810] sm:$0xff]
  %v4744 = vld [vmem:[%s2 + $0x818] sm:$0xff]
  %v4745 = vld [vmem:[%s2 + $0x820] sm:$0xff]
  %v4746 = vld [vmem:[%s2 + $0x828] sm:$0xff]
  %v4747 = vld [vmem:[%s2 + $0x830] sm:$0xff]
  %v4748 = vld [vmem:[%s2 + $0x838] sm:$0xff]
  %v4749 = vld [vmem:[%s2 + $0x840] sm:$0xff]
  %v4750 = vld [vmem:[%s2 + $0x848] sm:$0xff]
  %v4751 = vld [vmem:[%s2 + $0x850] sm:$0xff]
  %v4752 = vld [vmem:[%s2 + $0x858] sm:$0xff]
  %v4753 = vld [vmem:[%s2 + $0x860] sm:$0xff]
  %v4754 = vld [vmem:[%s2 + $0x868] sm:$0xff]
  %v4755 = vld [vmem:[%s2 + $0x870] sm:$0xff]
  %v4756 = vld [vmem:[%s2 + $0x878] sm:$0xff]
  %v4757 = vld [vmem:[%s2 + $0x880] sm:$0xff]
  %v4758 = vld [vmem:[%s2 + $0x888] sm:$0xff]
  %v4759 = vld [vmem:[%s2 + $0x890] sm:$0xff]
  %v4760 = vld [vmem:[%s2 + $0x898] sm:$0xff]
  %v4761 = vld [vmem:[%s2 + $0x8a0] sm:$0xff]
  %v4762 = vld [vmem:[%s2 + $0x8a8] sm:$0xff]
  %v4763 = vld [vmem:[%s2 + $0x8b0] sm:$0xff]
  %v4764 = vld [vmem:[%s2 + $0x8b8] sm:$0xff]
  %v4765 = vld [vmem:[%s2 + $0x8c0] sm:$0xff]
  %v4766 = vld [vmem:[%s2 + $0x8c8] sm:$0xff]
  %v4767 = vld [vmem:[%s2 + $0x8d0] sm:$0xff]
  %v4768 = vld [vmem:[%s2 + $0x8d8] sm:$0xff]
  %v4769 = vld [vmem:[%s2 + $0x8e0] sm:$0xff]
  %v4770 = vld [vmem:[%s2 + $0x8e8] sm:$0xff]
  %v4771 = vld [vmem:[%s2 + $0x8f0] sm:$0xff]
  %v4772 = vld [vmem:[%s2 + $0x8f8] sm:$0xff]
  %v4773 = vld [vmem:[%s2 + $0x900] sm:$0xff]
  %v4774 = vld [vmem:[%s2 + $0x908] sm:$0xff]
  %v4775 = vld [vmem:[%s2 + $0x910] sm:$0xff]
  %v4776 = vld [vmem:[%s2 + $0x918] sm:$0xff]
  %v4777 = vld [vmem:[%s2 + $0x920] sm:$0xff]
  %v4778 = vld [vmem:[%s2 + $0x928] sm:$0xff]
  %v4779 = vld [vmem:[%s2 + $0x930] sm:$0xff]
  %v4780 = vld [vmem:[%s2 + $0x938] sm:$0xff]
  %v4781 = vld [vmem:[%s2 + $0x940] sm:$0xff]
  %v4782 = vld [vmem:[%s2 + $0x948] sm:$0xff]
  %v4783 = vld [vmem:[%s2 + $0x950] sm:$0xff]
  %v4784 = vld [vmem:[%s2 + $0x958] sm:$0xff]
  %v4785 = vld [vmem:[%s2 + $0x960] sm:$0xff]
  %v4786 = vld [vmem:[%s2 + $0x968] sm:$0xff]
  %v4787 = vld [vmem:[%s2 + $0x970] sm:$0xff]
  %v4788 = vld [vmem:[%s2 + $0x978] sm:$0xff]
  %v4789 = vld [vmem:[%s2 + $0x980] sm:$0xff]
  %v4790 = vld [vmem:[%s2 + $0x988] sm:$0xff]
  %v4791 = vld [vmem:[%s2 + $0x990] sm:$0xff]
  %v4792 = vld [vmem:[%s2 + $0x998] sm:$0xff]
  %v4793 = vld [vmem:[%s2 + $0x9a0] sm:$0xff]
  %v4794 = vld [vmem:[%s2 + $0x9a8] sm:$0xff]
  %v4795 = vld [vmem:[%s2 + $0x9b0] sm:$0xff]
  %v4796 = vld [vmem:[%s2 + $0x9b8] sm:$0xff]
  %v4797 = vld [vmem:[%s2 + $0x9c0] sm:$0xff]
  %v4798 = vld [vmem:[%s2 + $0x9c8] sm:$0xff]
  %v4799 = vld [vmem:[%s2 + $0x9d0] sm:$0xff]
  %v4800 = vld [vmem:[%s2 + $0x9d8] sm:$0xff]
  %v4801 = vld [vmem:[%s2 + $0x9e0] sm:$0xff]
  %v4802 = vld [vmem:[%s2 + $0x9e8] sm:$0xff]
  %v4803 = vld [vmem:[%s2 + $0x9f0] sm:$0xff]
  %v4804 = vld [vmem:[%s2 + $0x9f8] sm:$0xff]
  %v4805 = vld [vmem:[%s2 + $0xa00] sm:$0xff]
  %v4806 = vld [vmem:[%s2 + $0xa08] sm:$0xff]
  %v4807 = vld [vmem:[%s2 + $0xa10] sm:$0xff]
  %v4808 = vld [vmem:[%s2 + $0xa18] sm:$0xff]
  %v4809 = vld [vmem:[%s2 + $0xa20] sm:$0xff]
  %v4810 = vld [vmem:[%s2 + $0xa28] sm:$0xff]
  %v4811 = vld [vmem:[%s2 + $0xa30] sm:$0xff]
  %v4812 = vld [vmem:[%s2 + $0xa38] sm:$0xff]
  %v4813 = vld [vmem:[%s2 + $0xa40] sm:$0xff]
  %v4814 = vld [vmem:[%s2 + $0xa48] sm:$0xff]
  %v4815 = vld [vmem:[%s2 + $0xa50] sm:$0xff]
  %v4816 = vld [vmem:[%s2 + $0xa58] sm:$0xff]
  %v4817 = vld [vmem:[%s2 + $0xa60] sm:$0xff]
  %v4818 = vld [vmem:[%s2 + $0xa68] sm:$0xff]
  %v4819 = vld [vmem:[%s2 + $0xa70] sm:$0xff]
  %v4820 = vld [vmem:[%s2 + $0xa78] sm:$0xff]
  %v4821 = vld [vmem:[%s2 + $0xa80] sm:$0xff]
  %v4822 = vld [vmem:[%s2 + $0xa88] sm:$0xff]
  %v4823 = vld [vmem:[%s2 + $0xa90] sm:$0xff]
  %v4824 = vld [vmem:[%s2 + $0xa98] sm:$0xff]
  %v4825 = vld [vmem:[%s2 + $0xaa0] sm:$0xff]
  %v4826 = vld [vmem:[%s2 + $0xaa8] sm:$0xff]
  %v4827 = vld [vmem:[%s2 + $0xab0] sm:$0xff]
  %v4828 = vld [vmem:[%s2 + $0xab8] sm:$0xff]
  %v4829 = vld [vmem:[%s2 + $0xac0] sm:$0xff]
  %v4830 = vld [vmem:[%s2 + $0xac8] sm:$0xff]
  %v4831 = vld [vmem:[%s2 + $0xad0] sm:$0xff]
  %v4832 = vld [vmem:[%s2 + $0xad8] sm:$0xff]
  %v4833 = vld [vmem:[%s2 + $0xae0] sm:$0xff]
  %v4834 = vld [vmem:[%s2 + $0xae8] sm:$0xff]
  %v4835 = vld [vmem:[%s2 + $0xaf0] sm:$0xff]
  %v4836 = vld [vmem:[%s2 + $0xaf8] sm:$0xff]
  %v4837 = vld [vmem:[%s2 + $0xb00] sm:$0xff]
  %v4838 = vld [vmem:[%s2 + $0xb08] sm:$0xff]
  %v4839 = vld [vmem:[%s2 + $0xb10] sm:$0xff]
  %v4840 = vld [vmem:[%s2 + $0xb18] sm:$0xff]
  %v4841 = vld [vmem:[%s2 + $0xb20] sm:$0xff]
  %v4842 = vld [vmem:[%s2 + $0xb28] sm:$0xff]
  %v4843 = vld [vmem:[%s2 + $0xb30] sm:$0xff]
  %v4844 = vld [vmem:[%s2 + $0xb38] sm:$0xff]
  %v4845 = vld [vmem:[%s2 + $0xb40] sm:$0xff]
  %v4846 = vld [vmem:[%s2 + $0xb48] sm:$0xff]
  %v4847 = vld [vmem:[%s2 + $0xb50] sm:$0xff]
  %v4848 = vld [vmem:[%s2 + $0xb58] sm:$0xff]
  %v4849 = vld [vmem:[%s2 + $0xb60] sm:$0xff]
  %v4850 = vld [vmem:[%s2 + $0xb68] sm:$0xff]
  %v4851 = vld [vmem:[%s2 + $0xb70] sm:$0xff]
  %v4852 = vld [vmem:[%s2 + $0xb78] sm:$0xff]
  %v4853 = vld [vmem:[%s2 + $0xb80] sm:$0xff]
  %v4854 = vld [vmem:[%s2 + $0xb88] sm:$0xff]
  %v4855 = vld [vmem:[%s2 + $0xb90] sm:$0xff]
  %v4856 = vld [vmem:[%s2 + $0xb98] sm:$0xff]
  %v4857 = vld [vmem:[%s2 + $0xba0] sm:$0xff]
  %v4858 = vld [vmem:[%s2 + $0xba8] sm:$0xff]
  %v4859 = vld [vmem:[%s2 + $0xbb0] sm:$0xff]
  %v4860 = vld [vmem:[%s2 + $0xbb8] sm:$0xff]
  %v4861 = vld [vmem:[%s2 + $0xbc0] sm:$0xff]
  %v4862 = vld [vmem:[%s2 + $0xbc8] sm:$0xff]
  %v4863 = vld [vmem:[%s2 + $0xbd0] sm:$0xff]
  %v4864 = vld [vmem:[%s2 + $0xbd8] sm:$0xff]
  %v4865 = vld [vmem:[%s2 + $0xbe0] sm:$0xff]
  %v4866 = vld [vmem:[%s2 + $0xbe8] sm:$0xff]
  %v4867 = vld [vmem:[%s2 + $0xbf0] sm:$0xff]
  %v4868 = vld [vmem:[%s2 + $0xbf8] sm:$0xff]
  %v4869 = vld [vmem:[%s2 + $0xc00] sm:$0xff]
  %v4870 = vld [vmem:[%s2 + $0xc08] sm:$0xff]
  %v4871 = vld [vmem:[%s2 + $0xc10] sm:$0xff]
  %v4872 = vld [vmem:[%s2 + $0xc18] sm:$0xff]
  %v4873 = vld [vmem:[%s2 + $0xc20] sm:$0xff]
  %v4874 = vld [vmem:[%s2 + $0xc28] sm:$0xff]
  %v4875 = vld [vmem:[%s2 + $0xc30] sm:$0xff]
  %v4876 = vld [vmem:[%s2 + $0xc38] sm:$0xff]
  %v4877 = vld [vmem:[%s2 + $0xc40] sm:$0xff]
  %v4878 = vld [vmem:[%s2 + $0xc48] sm:$0xff]
  %v4879 = vld [vmem:[%s2 + $0xc50] sm:$0xff]
  %v4880 = vld [vmem:[%s2 + $0xc58] sm:$0xff]
  %v4881 = vld [vmem:[%s2 + $0xc60] sm:$0xff]
  %v4882 = vld [vmem:[%s2 + $0xc68] sm:$0xff]
  %v4883 = vld [vmem:[%s2 + $0xc70] sm:$0xff]
  %v4884 = vld [vmem:[%s2 + $0xc78] sm:$0xff]
  %v4885 = vld [vmem:[%s2 + $0xc80] sm:$0xff]
  %v4886 = vld [vmem:[%s2 + $0xc88] sm:$0xff]
  %v4887 = vld [vmem:[%s2 + $0xc90] sm:$0xff]
  %v4888 = vld [vmem:[%s2 + $0xc98] sm:$0xff]
  %v4889 = vld [vmem:[%s2 + $0xca0] sm:$0xff]
  %v4890 = vld [vmem:[%s2 + $0xca8] sm:$0xff]
  %v4891 = vld [vmem:[%s2 + $0xcb0] sm:$0xff]
  %v4892 = vld [vmem:[%s2 + $0xcb8] sm:$0xff]
  %v4893 = vld [vmem:[%s2 + $0xcc0] sm:$0xff]
  %v4894 = vld [vmem:[%s2 + $0xcc8] sm:$0xff]
  %v4895 = vld [vmem:[%s2 + $0xcd0] sm:$0xff]
  %v4896 = vld [vmem:[%s2 + $0xcd8] sm:$0xff]
  %v4897 = vld [vmem:[%s2 + $0xce0] sm:$0xff]
  %v4898 = vld [vmem:[%s2 + $0xce8] sm:$0xff]
  %v4899 = vld [vmem:[%s2 + $0xcf0] sm:$0xff]
  %v4900 = vld [vmem:[%s2 + $0xcf8] sm:$0xff]
  %v4901 = vld [vmem:[%s2 + $0xd00] sm:$0xff]
  %v4902 = vld [vmem:[%s2 + $0xd08] sm:$0xff]
  %v4903 = vld [vmem:[%s2 + $0xd10] sm:$0xff]
  %v4904 = vld [vmem:[%s2 + $0xd18] sm:$0xff]
  %v4905 = vld [vmem:[%s2 + $0xd20] sm:$0xff]
  %v4906 = vld [vmem:[%s2 + $0xd28] sm:$0xff]
  %v4907 = vld [vmem:[%s2 + $0xd30] sm:$0xff]
  %v4908 = vld [vmem:[%s2 + $0xd38] sm:$0xff]
  %v4909 = vld [vmem:[%s2 + $0xd40] sm:$0xff]
  %v4910 = vld [vmem:[%s2 + $0xd48] sm:$0xff]
  %v4911 = vld [vmem:[%s2 + $0xd50] sm:$0xff]
  %v4912 = vld [vmem:[%s2 + $0xd58] sm:$0xff]
  %v4913 = vld [vmem:[%s2 + $0xd60] sm:$0xff]
  %v4914 = vld [vmem:[%s2 + $0xd68] sm:$0xff]
  %v4915 = vld [vmem:[%s2 + $0xd70] sm:$0xff]
  %v4916 = vld [vmem:[%s2 + $0xd78] sm:$0xff]
  %v4917 = vld [vmem:[%s2 + $0xd80] sm:$0xff]
  %v4918 = vld [vmem:[%s2 + $0xd88] sm:$0xff]
  %v4919 = vld [vmem:[%s2 + $0xd90] sm:$0xff]
  %v4920 = vld [vmem:[%s2 + $0xd98] sm:$0xff]
  %v4921 = vld [vmem:[%s2 + $0xda0] sm:$0xff]
  %v4922 = vld [vmem:[%s2 + $0xda8] sm:$0xff]
  %v4923 = vld [vmem:[%s2 + $0xdb0] sm:$0xff]
  %v4924 = vld [vmem:[%s2 + $0xdb8] sm:$0xff]
  %v4925 = vld [vmem:[%s2 + $0xdc0] sm:$0xff]
  %v4926 = vld [vmem:[%s2 + $0xdc8] sm:$0xff]
  %v4927 = vld [vmem:[%s2 + $0xdd0] sm:$0xff]
  %v4928 = vld [vmem:[%s2 + $0xdd8] sm:$0xff]
  %v4929 = vld [vmem:[%s2 + $0xde0] sm:$0xff]
  %v4930 = vld [vmem:[%s2 + $0xde8] sm:$0xff]
  %v4931 = vld [vmem:[%s2 + $0xdf0] sm:$0xff]
  %v4932 = vld [vmem:[%s2 + $0xdf8] sm:$0xff]
  %v4933 = vld [vmem:[%s2 + $0xe00] sm:$0xff]
  %v4934 = vld [vmem:[%s2 + $0xe08] sm:$0xff]
  %v4935 = vld [vmem:[%s2 + $0xe10] sm:$0xff]
  %v4936 = vld [vmem:[%s2 + $0xe18] sm:$0xff]
  %v4937 = vld [vmem:[%s2 + $0xe20] sm:$0xff]
  %v4938 = vld [vmem:[%s2 + $0xe28] sm:$0xff]
  %v4939 = vld [vmem:[%s2 + $0xe30] sm:$0xff]
  %v4940 = vld [vmem:[%s2 + $0xe38] sm:$0xff]
  %v4941 = vld [vmem:[%s2 + $0xe40] sm:$0xff]
  %v4942 = vld [vmem:[%s2 + $0xe48] sm:$0xff]
  %v4943 = vld [vmem:[%s2 + $0xe50] sm:$0xff]
  %v4944 = vld [vmem:[%s2 + $0xe58] sm:$0xff]
  %v4945 = vld [vmem:[%s2 + $0xe60] sm:$0xff]
  %v4946 = vld [vmem:[%s2 + $0xe68] sm:$0xff]
  %v4947 = vld [vmem:[%s2 + $0xe70] sm:$0xff]
  %v4948 = vld [vmem:[%s2 + $0xe78] sm:$0xff]
  %v4949 = vld [vmem:[%s2 + $0xe80] sm:$0xff]
  %v4950 = vld [vmem:[%s2 + $0xe88] sm:$0xff]
  %v4951 = vld [vmem:[%s2 + $0xe90] sm:$0xff]
  %v4952 = vld [vmem:[%s2 + $0xe98] sm:$0xff]
  %v4953 = vld [vmem:[%s2 + $0xea0] sm:$0xff]
  %v4954 = vld [vmem:[%s2 + $0xea8] sm:$0xff]
  %v4955 = vld [vmem:[%s2 + $0xeb0] sm:$0xff]
  %v4956 = vld [vmem:[%s2 + $0xeb8] sm:$0xff]
  %v4957 = vld [vmem:[%s2 + $0xec0] sm:$0xff]
  %v4958 = vld [vmem:[%s2 + $0xec8] sm:$0xff]
  %v4959 = vld [vmem:[%s2 + $0xed0] sm:$0xff]
  %v4960 = vld [vmem:[%s2 + $0xed8] sm:$0xff]
  %v4961 = vld [vmem:[%s2 + $0xee0] sm:$0xff]
  %v4962 = vld [vmem:[%s2 + $0xee8] sm:$0xff]
  %v4963 = vld [vmem:[%s2 + $0xef0] sm:$0xff]
  %v4964 = vld [vmem:[%s2 + $0xef8] sm:$0xff]
  %v4965 = vld [vmem:[%s2 + $0xf00] sm:$0xff]
  %v4966 = vld [vmem:[%s2 + $0xf08] sm:$0xff]
  %v4967 = vld [vmem:[%s2 + $0xf10] sm:$0xff]
  %v4968 = vld [vmem:[%s2 + $0xf18] sm:$0xff]
  %v4969 = vld [vmem:[%s2 + $0xf20] sm:$0xff]
  %v4970 = vld [vmem:[%s2 + $0xf28] sm:$0xff]
  %v4971 = vld [vmem:[%s2 + $0xf30] sm:$0xff]
  %v4972 = vld [vmem:[%s2 + $0xf38] sm:$0xff]
  %v4973 = vld [vmem:[%s2 + $0xf40] sm:$0xff]
  %v4974 = vld [vmem:[%s2 + $0xf48] sm:$0xff]
  %v4975 = vld [vmem:[%s2 + $0xf50] sm:$0xff]
  %v4976 = vld [vmem:[%s2 + $0xf58] sm:$0xff]
  %v4977 = vld [vmem:[%s2 + $0xf60] sm:$0xff]
  %v4978 = vld [vmem:[%s2 + $0xf68] sm:$0xff]
  %v4979 = vld [vmem:[%s2 + $0xf70] sm:$0xff]
  %v4980 = vld [vmem:[%s2 + $0xf78] sm:$0xff]
  %v4981 = vld [vmem:[%s2 + $0xf80] sm:$0xff]
  %v4982 = vld [vmem:[%s2 + $0xf88] sm:$0xff]
  %v4983 = vld [vmem:[%s2 + $0xf90] sm:$0xff]
  %v4984 = vld [vmem:[%s2 + $0xf98] sm:$0xff]
  %v4985 = vld [vmem:[%s2 + $0xfa0] sm:$0xff]
  %v4986 = vld [vmem:[%s2 + $0xfa8] sm:$0xff]
  %v4987 = vld [vmem:[%s2 + $0xfb0] sm:$0xff]
  %v4988 = vld [vmem:[%s2 + $0xfb8] sm:$0xff]
  %v4989 = vld [vmem:[%s2 + $0xfc0] sm:$0xff]
  %v4990 = vld [vmem:[%s2 + $0xfc8] sm:$0xff]
  %v4991 = vld [vmem:[%s2 + $0xfd0] sm:$0xff]
  %v4992 = vld [vmem:[%s2 + $0xfd8] sm:$0xff]
  %v4993 = vld [vmem:[%s2 + $0xfe0] sm:$0xff]
  %v4994 = vld [vmem:[%s2 + $0xfe8] sm:$0xff]
  %v4995 = vld [vmem:[%s2 + $0xff0] sm:$0xff]
  %v4996 = vld [vmem:[%s2 + $0xff8] sm:$0xff]
  %4997 = vmatpush.msra.mxu0 %v4605
  %4998 = vmatpush.msra.mxu0 %v4597
  %4999 = vmatpush.msra.mxu0 %v4589
  %5000 = vmatpush.msra.mxu0 %v4581
  %5001 = vmatpush.msra.mxu0 %v4573
  %5002 = vmatpush.msra.mxu0 %v4565
  %5003 = vmatpush.msra.mxu0 %v4557
  %5004 = vmatpush.msra.mxu0 %v4549
  %5005 = vmatpush.msra.mxu0 %v4541
  %5006 = vmatpush.msra.mxu0 %v4533
  %5007 = vmatpush.msra.mxu0 %v4525
  %5008 = vmatpush.msra.mxu0 %v4517
  %5009 = vmatpush.msra.mxu0 %v4509
  %5010 = vmatpush.msra.mxu0 %v4501
  %5011 = vmatpush.msra.mxu0 %v4493
  %5012 = vmatpush.msra.mxu0 %v4485
  %5013 = vmatmul.f32.gmra.mxu0 %v4472
  %v5014 = vpop.f32.mrf.mxu0
  %v5015 = vadd.f32 0.0, %v5014
  %5016 = vdwg.mxu0
  %5017 = vmatpush.msra.mxu0 %v4733
  %5018 = vmatpush.msra.mxu0 %v4725
  %5019 = vmatpush.msra.mxu0 %v4717
  %5020 = vmatpush.msra.mxu0 %v4709
  %5021 = vmatpush.msra.mxu0 %v4701
  %5022 = vmatpush.msra.mxu0 %v4693
  %5023 = vmatpush.msra.mxu0 %v4685
  %5024 = vmatpush.msra.mxu0 %v4677
  %5025 = vmatpush.msra.mxu0 %v4669
  %5026 = vmatpush.msra.mxu0 %v4661
  %5027 = vmatpush.msra.mxu0 %v4653
  %5028 = vmatpush.msra.mxu0 %v4645
  %5029 = vmatpush.msra.mxu0 %v4637
  %5030 = vmatpush.msra.mxu0 %v4629
  %5031 = vmatpush.msra.mxu0 %v4621
  %5032 = vmatpush.msra.mxu0 %v4613
  %5033 = vmatmul.f32.gmra.mxu0 %v4473
  %v5034 = vpop.f32.mrf.mxu0
  %v5035 = vadd.f32 %v5015, %v5034
  %5036 = vdwg.mxu0
  %5037 = vmatpush.msra.mxu0 %v4861
  %5038 = vmatpush.msra.mxu0 %v4853
  %5039 = vmatpush.msra.mxu0 %v4845
  %5040 = vmatpush.msra.mxu0 %v4837
  %5041 = vmatpush.msra.mxu0 %v4829
  %5042 = vmatpush.msra.mxu0 %v4821
  %5043 = vmatpush.msra.mxu0 %v4813
  %5044 = vmatpush.msra.mxu0 %v4805
  %5045 = vmatpush.msra.mxu0 %v4797
  %5046 = vmatpush.msra.mxu0 %v4789
  %5047 = vmatpush.msra.mxu0 %v4781
  %5048 = vmatpush.msra.mxu0 %v4773
  %5049 = vmatpush.msra.mxu0 %v4765
  %5050 = vmatpush.msra.mxu0 %v4757
  %5051 = vmatpush.msra.mxu0 %v4749
  %5052 = vmatpush.msra.mxu0 %v4741
  %5053 = vmatmul.f32.gmra.mxu0 %v4474
  %v5054 = vpop.f32.mrf.mxu0
  %v5055 = vadd.f32 %v5035, %v5054
  %5056 = vdwg.mxu0
  %5057 = vmatpush.msra.mxu0 %v4989
  %5058 = vmatpush.msra.mxu0 %v4981
  %5059 = vmatpush.msra.mxu0 %v4973
  %5060 = vmatpush.msra.mxu0 %v4965
  %5061 = vmatpush.msra.mxu0 %v4957
  %5062 = vmatpush.msra.mxu0 %v4949
  %5063 = vmatpush.msra.mxu0 %v4941
  %5064 = vmatpush.msra.mxu0 %v4933
  %5065 = vmatpush.msra.mxu0 %v4925
  %5066 = vmatpush.msra.mxu0 %v4917
  %5067 = vmatpush.msra.mxu0 %v4909
  %5068 = vmatpush.msra.mxu0 %v4901
  %5069 = vmatpush.msra.mxu0 %v4893
  %5070 = vmatpush.msra.mxu0 %v4885
  %5071 = vmatpush.msra.mxu0 %v4877
  %5072 = vmatpush.msra.mxu0 %v4869
  %5073 = vmatmul.f32.gmra.mxu0 %v4475
  %v5074 = vpop.f32.mrf.mxu0
  %v5075 = vadd.f32 %v5055, %v5074
  %5076 = vdwg.mxu0
  %5077 = vmatpush.msra.mxu0 %v4606
  %5078 = vmatpush.msra.mxu0 %v4598
  %5079 = vmatpush.msra.mxu0 %v4590
  %5080 = vmatpush.msra.mxu0 %v4582
  %5081 = vmatpush.msra.mxu0 %v4574
  %5082 = vmatpush.msra.mxu0 %v4566
  %5083 = vmatpush.msra.mxu0 %v4558
  %5084 = vmatpush.msra.mxu0 %v4550
  %5085 = vmatpush.msra.mxu0 %v4542
  %5086 = vmatpush.msra.mxu0 %v4534
  %5087 = vmatpush.msra.mxu0 %v4526
  %5088 = vmatpush.msra.mxu0 %v4518
  %5089 = vmatpush.msra.mxu0 %v4510
  %5090 = vmatpush.msra.mxu0 %v4502
  %5091 = vmatpush.msra.mxu0 %v4494
  %5092 = vmatpush.msra.mxu0 %v4486
  %5093 = vmatmul.f32.gmra.mxu0 %v4472
  %v5094 = vpop.f32.mrf.mxu0
  %v5095 = vadd.f32 0.0, %v5094
  %5096 = vdwg.mxu0
  %5097 = vmatpush.msra.mxu0 %v4734
  %5098 = vmatpush.msra.mxu0 %v4726
  %5099 = vmatpush.msra.mxu0 %v4718
  %5100 = vmatpush.msra.mxu0 %v4710
  %5101 = vmatpush.msra.mxu0 %v4702
  %5102 = vmatpush.msra.mxu0 %v4694
  %5103 = vmatpush.msra.mxu0 %v4686
  %5104 = vmatpush.msra.mxu0 %v4678
  %5105 = vmatpush.msra.mxu0 %v4670
  %5106 = vmatpush.msra.mxu0 %v4662
  %5107 = vmatpush.msra.mxu0 %v4654
  %5108 = vmatpush.msra.mxu0 %v4646
  %5109 = vmatpush.msra.mxu0 %v4638
  %5110 = vmatpush.msra.mxu0 %v4630
  %5111 = vmatpush.msra.mxu0 %v4622
  %5112 = vmatpush.msra.mxu0 %v4614
  %5113 = vmatmul.f32.gmra.mxu0 %v4473
  %v5114 = vpop.f32.mrf.mxu0
  %v5115 = vadd.f32 %v5095, %v5114
  %5116 = vdwg.mxu0
  %5117 = vmatpush.msra.mxu0 %v4862
  %5118 = vmatpush.msra.mxu0 %v4854
  %5119 = vmatpush.msra.mxu0 %v4846
  %5120 = vmatpush.msra.mxu0 %v4838
  %5121 = vmatpush.msra.mxu0 %v4830
  %5122 = vmatpush.msra.mxu0 %v4822
  %5123 = vmatpush.msra.mxu0 %v4814
  %5124 = vmatpush.msra.mxu0 %v4806
  %5125 = vmatpush.msra.mxu0 %v4798
  %5126 = vmatpush.msra.mxu0 %v4790
  %5127 = vmatpush.msra.mxu0 %v4782
  %5128 = vmatpush.msra.mxu0 %v4774
  %5129 = vmatpush.msra.mxu0 %v4766
  %5130 = vmatpush.msra.mxu0 %v4758
  %5131 = vmatpush.msra.mxu0 %v4750
  %5132 = vmatpush.msra.mxu0 %v4742
  %5133 = vmatmul.f32.gmra.mxu0 %v4474
  %v5134 = vpop.f32.mrf.mxu0
  %v5135 = vadd.f32 %v5115, %v5134
  %5136 = vdwg.mxu0
  %5137 = vmatpush.msra.mxu0 %v4990
  %5138 = vmatpush.msra.mxu0 %v4982
  %5139 = vmatpush.msra.mxu0 %v4974
  %5140 = vmatpush.msra.mxu0 %v4966
  %5141 = vmatpush.msra.mxu0 %v4958
  %5142 = vmatpush.msra.mxu0 %v4950
  %5143 = vmatpush.msra.mxu0 %v4942
  %5144 = vmatpush.msra.mxu0 %v4934
  %5145 = vmatpush.msra.mxu0 %v4926
  %5146 = vmatpush.msra.mxu0 %v4918
  %5147 = vmatpush.msra.mxu0 %v4910
  %5148 = vmatpush.msra.mxu0 %v4902
  %5149 = vmatpush.msra.mxu0 %v4894
  %5150 = vmatpush.msra.mxu0 %v4886
  %5151 = vmatpush.msra.mxu0 %v4878
  %5152 = vmatpush.msra.mxu0 %v4870
  %5153 = vmatmul.f32.gmra.mxu0 %v4475
  %v5154 = vpop.f32.mrf.mxu0
  %v5155 = vadd.f32 %v5135, %v5154
  %5156 = vdwg.mxu0
  %5157 = vmatpush.msra.mxu0 %v4607
  %5158 = vmatpush.msra.mxu0 %v4599
  %5159 = vmatpush.msra.mxu0 %v4591
  %5160 = vmatpush.msra.mxu0 %v4583
  %5161 = vmatpush.msra.mxu0 %v4575
  %5162 = vmatpush.msra.mxu0 %v4567
  %5163 = vmatpush.msra.mxu0 %v4559
  %5164 = vmatpush.msra.mxu0 %v4551
  %5165 = vmatpush.msra.mxu0 %v4543
  %5166 = vmatpush.msra.mxu0 %v4535
  %5167 = vmatpush.msra.mxu0 %v4527
  %5168 = vmatpush.msra.mxu0 %v4519
  %5169 = vmatpush.msra.mxu0 %v4511
  %5170 = vmatpush.msra.mxu0 %v4503
  %5171 = vmatpush.msra.mxu0 %v4495
  %5172 = vmatpush.msra.mxu0 %v4487
  %5173 = vmatmul.f32.gmra.mxu0 %v4472
  %v5174 = vpop.f32.mrf.mxu0
  %v5175 = vadd.f32 0.0, %v5174
  %5176 = vdwg.mxu0
  %5177 = vmatpush.msra.mxu0 %v4735
  %5178 = vmatpush.msra.mxu0 %v4727
  %5179 = vmatpush.msra.mxu0 %v4719
  %5180 = vmatpush.msra.mxu0 %v4711
  %5181 = vmatpush.msra.mxu0 %v4703
  %5182 = vmatpush.msra.mxu0 %v4695
  %5183 = vmatpush.msra.mxu0 %v4687
  %5184 = vmatpush.msra.mxu0 %v4679
  %5185 = vmatpush.msra.mxu0 %v4671
  %5186 = vmatpush.msra.mxu0 %v4663
  %5187 = vmatpush.msra.mxu0 %v4655
  %5188 = vmatpush.msra.mxu0 %v4647
  %5189 = vmatpush.msra.mxu0 %v4639
  %5190 = vmatpush.msra.mxu0 %v4631
  %5191 = vmatpush.msra.mxu0 %v4623
  %5192 = vmatpush.msra.mxu0 %v4615
  %5193 = vmatmul.f32.gmra.mxu0 %v4473
  %v5194 = vpop.f32.mrf.mxu0
  %v5195 = vadd.f32 %v5175, %v5194
  %5196 = vdwg.mxu0
  %5197 = vmatpush.msra.mxu0 %v4863
  %5198 = vmatpush.msra.mxu0 %v4855
  %5199 = vmatpush.msra.mxu0 %v4847
  %5200 = vmatpush.msra.mxu0 %v4839
  %5201 = vmatpush.msra.mxu0 %v4831
  %5202 = vmatpush.msra.mxu0 %v4823
  %5203 = vmatpush.msra.mxu0 %v4815
  %5204 = vmatpush.msra.mxu0 %v4807
  %5205 = vmatpush.msra.mxu0 %v4799
  %5206 = vmatpush.msra.mxu0 %v4791
  %5207 = vmatpush.msra.mxu0 %v4783
  %5208 = vmatpush.msra.mxu0 %v4775
  %5209 = vmatpush.msra.mxu0 %v4767
  %5210 = vmatpush.msra.mxu0 %v4759
  %5211 = vmatpush.msra.mxu0 %v4751
  %5212 = vmatpush.msra.mxu0 %v4743
  %5213 = vmatmul.f32.gmra.mxu0 %v4474
  %v5214 = vpop.f32.mrf.mxu0
  %v5215 = vadd.f32 %v5195, %v5214
  %5216 = vdwg.mxu0
  %5217 = vmatpush.msra.mxu0 %v4991
  %5218 = vmatpush.msra.mxu0 %v4983
  %5219 = vmatpush.msra.mxu0 %v4975
  %5220 = vmatpush.msra.mxu0 %v4967
  %5221 = vmatpush.msra.mxu0 %v4959
  %5222 = vmatpush.msra.mxu0 %v4951
  %5223 = vmatpush.msra.mxu0 %v4943
  %5224 = vmatpush.msra.mxu0 %v4935
  %5225 = vmatpush.msra.mxu0 %v4927
  %5226 = vmatpush.msra.mxu0 %v4919
  %5227 = vmatpush.msra.mxu0 %v4911
  %5228 = vmatpush.msra.mxu0 %v4903
  %5229 = vmatpush.msra.mxu0 %v4895
  %5230 = vmatpush.msra.mxu0 %v4887
  %5231 = vmatpush.msra.mxu0 %v4879
  %5232 = vmatpush.msra.mxu0 %v4871
  %5233 = vmatmul.f32.gmra.mxu0 %v4475
  %v5234 = vpop.f32.mrf.mxu0
  %v5235 = vadd.f32 %v5215, %v5234
  %5236 = vdwg.mxu0
  %5237 = vmatpush.msra.mxu0 %v4608
  %5238 = vmatpush.msra.mxu0 %v4600
  %5239 = vmatpush.msra.mxu0 %v4592
  %5240 = vmatpush.msra.mxu0 %v4584
  %5241 = vmatpush.msra.mxu0 %v4576
  %5242 = vmatpush.msra.mxu0 %v4568
  %5243 = vmatpush.msra.mxu0 %v4560
  %5244 = vmatpush.msra.mxu0 %v4552
  %5245 = vmatpush.msra.mxu0 %v4544
  %5246 = vmatpush.msra.mxu0 %v4536
  %5247 = vmatpush.msra.mxu0 %v4528
  %5248 = vmatpush.msra.mxu0 %v4520
  %5249 = vmatpush.msra.mxu0 %v4512
  %5250 = vmatpush.msra.mxu0 %v4504
  %5251 = vmatpush.msra.mxu0 %v4496
  %5252 = vmatpush.msra.mxu0 %v4488
  %5253 = vmatmul.f32.gmra.mxu0 %v4472
  %v5254 = vpop.f32.mrf.mxu0
  %v5255 = vadd.f32 0.0, %v5254
  %5256 = vdwg.mxu0
  %5257 = vmatpush.msra.mxu0 %v4736
  %5258 = vmatpush.msra.mxu0 %v4728
  %5259 = vmatpush.msra.mxu0 %v4720
  %5260 = vmatpush.msra.mxu0 %v4712
  %5261 = vmatpush.msra.mxu0 %v4704
  %5262 = vmatpush.msra.mxu0 %v4696
  %5263 = vmatpush.msra.mxu0 %v4688
  %5264 = vmatpush.msra.mxu0 %v4680
  %5265 = vmatpush.msra.mxu0 %v4672
  %5266 = vmatpush.msra.mxu0 %v4664
  %5267 = vmatpush.msra.mxu0 %v4656
  %5268 = vmatpush.msra.mxu0 %v4648
  %5269 = vmatpush.msra.mxu0 %v4640
  %5270 = vmatpush.msra.mxu0 %v4632
  %5271 = vmatpush.msra.mxu0 %v4624
  %5272 = vmatpush.msra.mxu0 %v4616
  %5273 = vmatmul.f32.gmra.mxu0 %v4473
  %v5274 = vpop.f32.mrf.mxu0
  %v5275 = vadd.f32 %v5255, %v5274
  %5276 = vdwg.mxu0
  %5277 = vmatpush.msra.mxu0 %v4864
  %5278 = vmatpush.msra.mxu0 %v4856
  %5279 = vmatpush.msra.mxu0 %v4848
  %5280 = vmatpush.msra.mxu0 %v4840
  %5281 = vmatpush.msra.mxu0 %v4832
  %5282 = vmatpush.msra.mxu0 %v4824
  %5283 = vmatpush.msra.mxu0 %v4816
  %5284 = vmatpush.msra.mxu0 %v4808
  %5285 = vmatpush.msra.mxu0 %v4800
  %5286 = vmatpush.msra.mxu0 %v4792
  %5287 = vmatpush.msra.mxu0 %v4784
  %5288 = vmatpush.msra.mxu0 %v4776
  %5289 = vmatpush.msra.mxu0 %v4768
  %5290 = vmatpush.msra.mxu0 %v4760
  %5291 = vmatpush.msra.mxu0 %v4752
  %5292 = vmatpush.msra.mxu0 %v4744
  %5293 = vmatmul.f32.gmra.mxu0 %v4474
  %v5294 = vpop.f32.mrf.mxu0
  %v5295 = vadd.f32 %v5275, %v5294
  %5296 = vdwg.mxu0
  %5297 = vmatpush.msra.mxu0 %v4992
  %5298 = vmatpush.msra.mxu0 %v4984
  %5299 = vmatpush.msra.mxu0 %v4976
  %5300 = vmatpush.msra.mxu0 %v4968
  %5301 = vmatpush.msra.mxu0 %v4960
  %5302 = vmatpush.msra.mxu0 %v4952
  %5303 = vmatpush.msra.mxu0 %v4944
  %5304 = vmatpush.msra.mxu0 %v4936
  %5305 = vmatpush.msra.mxu0 %v4928
  %5306 = vmatpush.msra.mxu0 %v4920
  %5307 = vmatpush.msra.mxu0 %v4912
  %5308 = vmatpush.msra.mxu0 %v4904
  %5309 = vmatpush.msra.mxu0 %v4896
  %5310 = vmatpush.msra.mxu0 %v4888
  %5311 = vmatpush.msra.mxu0 %v4880
  %5312 = vmatpush.msra.mxu0 %v4872
  %5313 = vmatmul.f32.gmra.mxu0 %v4475
  %v5314 = vpop.f32.mrf.mxu0
  %v5315 = vadd.f32 %v5295, %v5314
  %5316 = vdwg.mxu0
  %5317 = vmatpush.msra.mxu0 %v4609
  %5318 = vmatpush.msra.mxu0 %v4601
  %5319 = vmatpush.msra.mxu0 %v4593
  %5320 = vmatpush.msra.mxu0 %v4585
  %5321 = vmatpush.msra.mxu0 %v4577
  %5322 = vmatpush.msra.mxu0 %v4569
  %5323 = vmatpush.msra.mxu0 %v4561
  %5324 = vmatpush.msra.mxu0 %v4553
  %5325 = vmatpush.msra.mxu0 %v4545
  %5326 = vmatpush.msra.mxu0 %v4537
  %5327 = vmatpush.msra.mxu0 %v4529
  %5328 = vmatpush.msra.mxu0 %v4521
  %5329 = vmatpush.msra.mxu0 %v4513
  %5330 = vmatpush.msra.mxu0 %v4505
  %5331 = vmatpush.msra.mxu0 %v4497
  %5332 = vmatpush.msra.mxu0 %v4489
  %5333 = vmatmul.f32.gmra.mxu0 %v4472
  %v5334 = vpop.f32.mrf.mxu0
  %v5335 = vadd.f32 0.0, %v5334
  %5336 = vdwg.mxu0
  %5337 = vmatpush.msra.mxu0 %v4737
  %5338 = vmatpush.msra.mxu0 %v4729
  %5339 = vmatpush.msra.mxu0 %v4721
  %5340 = vmatpush.msra.mxu0 %v4713
  %5341 = vmatpush.msra.mxu0 %v4705
  %5342 = vmatpush.msra.mxu0 %v4697
  %5343 = vmatpush.msra.mxu0 %v4689
  %5344 = vmatpush.msra.mxu0 %v4681
  %5345 = vmatpush.msra.mxu0 %v4673
  %5346 = vmatpush.msra.mxu0 %v4665
  %5347 = vmatpush.msra.mxu0 %v4657
  %5348 = vmatpush.msra.mxu0 %v4649
  %5349 = vmatpush.msra.mxu0 %v4641
  %5350 = vmatpush.msra.mxu0 %v4633
  %5351 = vmatpush.msra.mxu0 %v4625
  %5352 = vmatpush.msra.mxu0 %v4617
  %5353 = vmatmul.f32.gmra.mxu0 %v4473
  %v5354 = vpop.f32.mrf.mxu0
  %v5355 = vadd.f32 %v5335, %v5354
  %5356 = vdwg.mxu0
  %5357 = vmatpush.msra.mxu0 %v4865
  %5358 = vmatpush.msra.mxu0 %v4857
  %5359 = vmatpush.msra.mxu0 %v4849
  %5360 = vmatpush.msra.mxu0 %v4841
  %5361 = vmatpush.msra.mxu0 %v4833
  %5362 = vmatpush.msra.mxu0 %v4825
  %5363 = vmatpush.msra.mxu0 %v4817
  %5364 = vmatpush.msra.mxu0 %v4809
  %5365 = vmatpush.msra.mxu0 %v4801
  %5366 = vmatpush.msra.mxu0 %v4793
  %5367 = vmatpush.msra.mxu0 %v4785
  %5368 = vmatpush.msra.mxu0 %v4777
  %5369 = vmatpush.msra.mxu0 %v4769
  %5370 = vmatpush.msra.mxu0 %v4761
  %5371 = vmatpush.msra.mxu0 %v4753
  %5372 = vmatpush.msra.mxu0 %v4745
  %5373 = vmatmul.f32.gmra.mxu0 %v4474
  %v5374 = vpop.f32.mrf.mxu0
  %v5375 = vadd.f32 %v5355, %v5374
  %5376 = vdwg.mxu0
  %5377 = vmatpush.msra.mxu0 %v4993
  %5378 = vmatpush.msra.mxu0 %v4985
  %5379 = vmatpush.msra.mxu0 %v4977
  %5380 = vmatpush.msra.mxu0 %v4969
  %5381 = vmatpush.msra.mxu0 %v4961
  %5382 = vmatpush.msra.mxu0 %v4953
  %5383 = vmatpush.msra.mxu0 %v4945
  %5384 = vmatpush.msra.mxu0 %v4937
  %5385 = vmatpush.msra.mxu0 %v4929
  %5386 = vmatpush.msra.mxu0 %v4921
  %5387 = vmatpush.msra.mxu0 %v4913
  %5388 = vmatpush.msra.mxu0 %v4905
  %5389 = vmatpush.msra.mxu0 %v4897
  %5390 = vmatpush.msra.mxu0 %v4889
  %5391 = vmatpush.msra.mxu0 %v4881
  %5392 = vmatpush.msra.mxu0 %v4873
  %5393 = vmatmul.f32.gmra.mxu0 %v4475
  %v5394 = vpop.f32.mrf.mxu0
  %v5395 = vadd.f32 %v5375, %v5394
  %5396 = vdwg.mxu0
  %5397 = vmatpush.msra.mxu0 %v4610
  %5398 = vmatpush.msra.mxu0 %v4602
  %5399 = vmatpush.msra.mxu0 %v4594
  %5400 = vmatpush.msra.mxu0 %v4586
  %5401 = vmatpush.msra.mxu0 %v4578
  %5402 = vmatpush.msra.mxu0 %v4570
  %5403 = vmatpush.msra.mxu0 %v4562
  %5404 = vmatpush.msra.mxu0 %v4554
  %5405 = vmatpush.msra.mxu0 %v4546
  %5406 = vmatpush.msra.mxu0 %v4538
  %5407 = vmatpush.msra.mxu0 %v4530
  %5408 = vmatpush.msra.mxu0 %v4522
  %5409 = vmatpush.msra.mxu0 %v4514
  %5410 = vmatpush.msra.mxu0 %v4506
  %5411 = vmatpush.msra.mxu0 %v4498
  %5412 = vmatpush.msra.mxu0 %v4490
  %5413 = vmatmul.f32.gmra.mxu0 %v4472
  %v5414 = vpop.f32.mrf.mxu0
  %v5415 = vadd.f32 0.0, %v5414
  %5416 = vdwg.mxu0
  %5417 = vmatpush.msra.mxu0 %v4738
  %5418 = vmatpush.msra.mxu0 %v4730
  %5419 = vmatpush.msra.mxu0 %v4722
  %5420 = vmatpush.msra.mxu0 %v4714
  %5421 = vmatpush.msra.mxu0 %v4706
  %5422 = vmatpush.msra.mxu0 %v4698
  %5423 = vmatpush.msra.mxu0 %v4690
  %5424 = vmatpush.msra.mxu0 %v4682
  %5425 = vmatpush.msra.mxu0 %v4674
  %5426 = vmatpush.msra.mxu0 %v4666
  %5427 = vmatpush.msra.mxu0 %v4658
  %5428 = vmatpush.msra.mxu0 %v4650
  %5429 = vmatpush.msra.mxu0 %v4642
  %5430 = vmatpush.msra.mxu0 %v4634
  %5431 = vmatpush.msra.mxu0 %v4626
  %5432 = vmatpush.msra.mxu0 %v4618
  %5433 = vmatmul.f32.gmra.mxu0 %v4473
  %v5434 = vpop.f32.mrf.mxu0
  %v5435 = vadd.f32 %v5415, %v5434
  %5436 = vdwg.mxu0
  %5437 = vmatpush.msra.mxu0 %v4866
  %5438 = vmatpush.msra.mxu0 %v4858
  %5439 = vmatpush.msra.mxu0 %v4850
  %5440 = vmatpush.msra.mxu0 %v4842
  %5441 = vmatpush.msra.mxu0 %v4834
  %5442 = vmatpush.msra.mxu0 %v4826
  %5443 = vmatpush.msra.mxu0 %v4818
  %5444 = vmatpush.msra.mxu0 %v4810
  %5445 = vmatpush.msra.mxu0 %v4802
  %5446 = vmatpush.msra.mxu0 %v4794
  %5447 = vmatpush.msra.mxu0 %v4786
  %5448 = vmatpush.msra.mxu0 %v4778
  %5449 = vmatpush.msra.mxu0 %v4770
  %5450 = vmatpush.msra.mxu0 %v4762
  %5451 = vmatpush.msra.mxu0 %v4754
  %5452 = vmatpush.msra.mxu0 %v4746
  %5453 = vmatmul.f32.gmra.mxu0 %v4474
  %v5454 = vpop.f32.mrf.mxu0
  %v5455 = vadd.f32 %v5435, %v5454
  %5456 = vdwg.mxu0
  %5457 = vmatpush.msra.mxu0 %v4994
  %5458 = vmatpush.msra.mxu0 %v4986
  %5459 = vmatpush.msra.mxu0 %v4978
  %5460 = vmatpush.msra.mxu0 %v4970
  %5461 = vmatpush.msra.mxu0 %v4962
  %5462 = vmatpush.msra.mxu0 %v4954
  %5463 = vmatpush.msra.mxu0 %v4946
  %5464 = vmatpush.msra.mxu0 %v4938
  %5465 = vmatpush.msra.mxu0 %v4930
  %5466 = vmatpush.msra.mxu0 %v4922
  %5467 = vmatpush.msra.mxu0 %v4914
  %5468 = vmatpush.msra.mxu0 %v4906
  %5469 = vmatpush.msra.mxu0 %v4898
  %5470 = vmatpush.msra.mxu0 %v4890
  %5471 = vmatpush.msra.mxu0 %v4882
  %5472 = vmatpush.msra.mxu0 %v4874
  %5473 = vmatmul.f32.gmra.mxu0 %v4475
  %v5474 = vpop.f32.mrf.mxu0
  %v5475 = vadd.f32 %v5455, %v5474
  %5476 = vdwg.mxu0
  %5477 = vmatpush.msra.mxu0 %v4611
  %5478 = vmatpush.msra.mxu0 %v4603
  %5479 = vmatpush.msra.mxu0 %v4595
  %5480 = vmatpush.msra.mxu0 %v4587
  %5481 = vmatpush.msra.mxu0 %v4579
  %5482 = vmatpush.msra.mxu0 %v4571
  %5483 = vmatpush.msra.mxu0 %v4563
  %5484 = vmatpush.msra.mxu0 %v4555
  %5485 = vmatpush.msra.mxu0 %v4547
  %5486 = vmatpush.msra.mxu0 %v4539
  %5487 = vmatpush.msra.mxu0 %v4531
  %5488 = vmatpush.msra.mxu0 %v4523
  %5489 = vmatpush.msra.mxu0 %v4515
  %5490 = vmatpush.msra.mxu0 %v4507
  %5491 = vmatpush.msra.mxu0 %v4499
  %5492 = vmatpush.msra.mxu0 %v4491
  %5493 = vmatmul.f32.gmra.mxu0 %v4472
  %v5494 = vpop.f32.mrf.mxu0
  %v5495 = vadd.f32 0.0, %v5494
  %5496 = vdwg.mxu0
  %5497 = vmatpush.msra.mxu0 %v4739
  %5498 = vmatpush.msra.mxu0 %v4731
  %5499 = vmatpush.msra.mxu0 %v4723
  %5500 = vmatpush.msra.mxu0 %v4715
  %5501 = vmatpush.msra.mxu0 %v4707
  %5502 = vmatpush.msra.mxu0 %v4699
  %5503 = vmatpush.msra.mxu0 %v4691
  %5504 = vmatpush.msra.mxu0 %v4683
  %5505 = vmatpush.msra.mxu0 %v4675
  %5506 = vmatpush.msra.mxu0 %v4667
  %5507 = vmatpush.msra.mxu0 %v4659
  %5508 = vmatpush.msra.mxu0 %v4651
  %5509 = vmatpush.msra.mxu0 %v4643
  %5510 = vmatpush.msra.mxu0 %v4635
  %5511 = vmatpush.msra.mxu0 %v4627
  %5512 = vmatpush.msra.mxu0 %v4619
  %5513 = vmatmul.f32.gmra.mxu0 %v4473
  %v5514 = vpop.f32.mrf.mxu0
  %v5515 = vadd.f32 %v5495, %v5514
  %5516 = vdwg.mxu0
  %5517 = vmatpush.msra.mxu0 %v4867
  %5518 = vmatpush.msra.mxu0 %v4859
  %5519 = vmatpush.msra.mxu0 %v4851
  %5520 = vmatpush.msra.mxu0 %v4843
  %5521 = vmatpush.msra.mxu0 %v4835
  %5522 = vmatpush.msra.mxu0 %v4827
  %5523 = vmatpush.msra.mxu0 %v4819
  %5524 = vmatpush.msra.mxu0 %v4811
  %5525 = vmatpush.msra.mxu0 %v4803
  %5526 = vmatpush.msra.mxu0 %v4795
  %5527 = vmatpush.msra.mxu0 %v4787
  %5528 = vmatpush.msra.mxu0 %v4779
  %5529 = vmatpush.msra.mxu0 %v4771
  %5530 = vmatpush.msra.mxu0 %v4763
  %5531 = vmatpush.msra.mxu0 %v4755
  %5532 = vmatpush.msra.mxu0 %v4747
  %5533 = vmatmul.f32.gmra.mxu0 %v4474
  %v5534 = vpop.f32.mrf.mxu0
  %v5535 = vadd.f32 %v5515, %v5534
  %5536 = vdwg.mxu0
  %5537 = vmatpush.msra.mxu0 %v4995
  %5538 = vmatpush.msra.mxu0 %v4987
  %5539 = vmatpush.msra.mxu0 %v4979
  %5540 = vmatpush.msra.mxu0 %v4971
  %5541 = vmatpush.msra.mxu0 %v4963
  %5542 = vmatpush.msra.mxu0 %v4955
  %5543 = vmatpush.msra.mxu0 %v4947
  %5544 = vmatpush.msra.mxu0 %v4939
  %5545 = vmatpush.msra.mxu0 %v4931
  %5546 = vmatpush.msra.mxu0 %v4923
  %5547 = vmatpush.msra.mxu0 %v4915
  %5548 = vmatpush.msra.mxu0 %v4907
  %5549 = vmatpush.msra.mxu0 %v4899
  %5550 = vmatpush.msra.mxu0 %v4891
  %5551 = vmatpush.msra.mxu0 %v4883
  %5552 = vmatpush.msra.mxu0 %v4875
  %5553 = vmatmul.f32.gmra.mxu0 %v4475
  %v5554 = vpop.f32.mrf.mxu0
  %v5555 = vadd.f32 %v5535, %v5554
  %5556 = vdwg.mxu0
  %5557 = vmatpush.msra.mxu0 %v4612
  %5558 = vmatpush.msra.mxu0 %v4604
  %5559 = vmatpush.msra.mxu0 %v4596
  %5560 = vmatpush.msra.mxu0 %v4588
  %5561 = vmatpush.msra.mxu0 %v4580
  %5562 = vmatpush.msra.mxu0 %v4572
  %5563 = vmatpush.msra.mxu0 %v4564
  %5564 = vmatpush.msra.mxu0 %v4556
  %5565 = vmatpush.msra.mxu0 %v4548
  %5566 = vmatpush.msra.mxu0 %v4540
  %5567 = vmatpush.msra.mxu0 %v4532
  %5568 = vmatpush.msra.mxu0 %v4524
  %5569 = vmatpush.msra.mxu0 %v4516
  %5570 = vmatpush.msra.mxu0 %v4508
  %5571 = vmatpush.msra.mxu0 %v4500
  %5572 = vmatpush.msra.mxu0 %v4492
  %5573 = vmatmul.f32.gmra.mxu0 %v4472
  %v5574 = vpop.f32.mrf.mxu0
  %v5575 = vadd.f32 0.0, %v5574
  %5576 = vdwg.mxu0
  %5577 = vmatpush.msra.mxu0 %v4740
  %5578 = vmatpush.msra.mxu0 %v4732
  %5579 = vmatpush.msra.mxu0 %v4724
  %5580 = vmatpush.msra.mxu0 %v4716
  %5581 = vmatpush.msra.mxu0 %v4708
  %5582 = vmatpush.msra.mxu0 %v4700
  %5583 = vmatpush.msra.mxu0 %v4692
  %5584 = vmatpush.msra.mxu0 %v4684
  %5585 = vmatpush.msra.mxu0 %v4676
  %5586 = vmatpush.msra.mxu0 %v4668
  %5587 = vmatpush.msra.mxu0 %v4660
  %5588 = vmatpush.msra.mxu0 %v4652
  %5589 = vmatpush.msra.mxu0 %v4644
  %5590 = vmatpush.msra.mxu0 %v4636
  %5591 = vmatpush.msra.mxu0 %v4628
  %5592 = vmatpush.msra.mxu0 %v4620
  %5593 = vmatmul.f32.gmra.mxu0 %v4473
  %v5594 = vpop.f32.mrf.mxu0
  %v5595 = vadd.f32 %v5575, %v5594
  %5596 = vdwg.mxu0
  %5597 = vmatpush.msra.mxu0 %v4868
  %5598 = vmatpush.msra.mxu0 %v4860
  %5599 = vmatpush.msra.mxu0 %v4852
  %5600 = vmatpush.msra.mxu0 %v4844
  %5601 = vmatpush.msra.mxu0 %v4836
  %5602 = vmatpush.msra.mxu0 %v4828
  %5603 = vmatpush.msra.mxu0 %v4820
  %5604 = vmatpush.msra.mxu0 %v4812
  %5605 = vmatpush.msra.mxu0 %v4804
  %5606 = vmatpush.msra.mxu0 %v4796
  %5607 = vmatpush.msra.mxu0 %v4788
  %5608 = vmatpush.msra.mxu0 %v4780
  %5609 = vmatpush.msra.mxu0 %v4772
  %5610 = vmatpush.msra.mxu0 %v4764
  %5611 = vmatpush.msra.mxu0 %v4756
  %5612 = vmatpush.msra.mxu0 %v4748
  %5613 = vmatmul.f32.gmra.mxu0 %v4474
  %v5614 = vpop.f32.mrf.mxu0
  %v5615 = vadd.f32 %v5595, %v5614
  %5616 = vdwg.mxu0
  %5617 = vmatpush.msra.mxu0 %v4996
  %5618 = vmatpush.msra.mxu0 %v4988
  %5619 = vmatpush.msra.mxu0 %v4980
  %5620 = vmatpush.msra.mxu0 %v4972
  %5621 = vmatpush.msra.mxu0 %v4964
  %5622 = vmatpush.msra.mxu0 %v4956
  %5623 = vmatpush.msra.mxu0 %v4948
  %5624 = vmatpush.msra.mxu0 %v4940
  %5625 = vmatpush.msra.mxu0 %v4932
  %5626 = vmatpush.msra.mxu0 %v4924
  %5627 = vmatpush.msra.mxu0 %v4916
  %5628 = vmatpush.msra.mxu0 %v4908
  %5629 = vmatpush.msra.mxu0 %v4900
  %5630 = vmatpush.msra.mxu0 %v4892
  %5631 = vmatpush.msra.mxu0 %v4884
  %5632 = vmatpush.msra.mxu0 %v4876
  %5633 = vmatmul.f32.gmra.mxu0 %v4475
  %v5634 = vpop.f32.mrf.mxu0
  %v5635 = vadd.f32 %v5615, %v5634
  %5636 = vdwg.mxu0
  %v5637 = vadd.f32 %v4477, %v5075
  %v5638 = vadd.f32 %v4478, %v5155
  %v5639 = vadd.f32 %v4479, %v5235
  %v5640 = vadd.f32 %v4480, %v5315
  %v5641 = vadd.f32 %v4481, %v5395
  %v5642 = vadd.f32 %v4482, %v5475
  %v5643 = vadd.f32 %v4483, %v5555
  %v5644 = vadd.f32 %v4484, %v5635
  %v5645 = vxor.u32 %v5637, 2147483648
  %v5646 = vxor.u32 %v5638, 2147483648
  %v5647 = vxor.u32 %v5639, 2147483648
  %v5648 = vxor.u32 %v5640, 2147483648
  %v5649 = vxor.u32 %v5641, 2147483648
  %v5650 = vxor.u32 %v5642, 2147483648
  %v5651 = vmul.f32 %v5645, 1.442695
  %v5652 = vpow.pop %v5651
  %v5653 = vmul.f32 %v5646, 1.442695
  %v5654 = vpow.pop %v5653
  %v5655 = vmul.f32 %v5647, 1.442695
  %v5656 = vpow.pop %v5655
  %v5657 = vmul.f32 %v5648, 1.442695
  %v5658 = vpow.pop %v5657
  %v5659 = vmul.f32 %v5649, 1.442695
  %v5660 = vpow.pop %v5659
  %v5661 = vmul.f32 %v5650, 1.442695
  %v5662 = vpow.pop %v5661
  %v5663 = vadd.f32 %v5652, 1.0
  %v5664 = vadd.f32 %v5654, 1.0
  %v5665 = vadd.f32 %v5656, 1.0
  %v5666 = vadd.f32 %v5658, 1.0
  %v5667 = vadd.f32 %v5660, 1.0
  %v5668 = vadd.f32 %v5662, 1.0
  %v5669 = vrcp.pop %v5663
  %v5670 = vmul.f32 %v5663, %v5669
  %v5671 = vsub.f32 1.0, %v5670
  %v5672 = vmul.f32 %v5669, %v5671
  %v5673 = vadd.f32 %v5669, %v5672
  %vm5674 = vweird.f32 %v5663
  %vm5675 = vweird.f32 %v5669
  %vm5676 = vmor %vm5674, %vm5675
  %v5677 = vsel %vm5676, %v5669, %v5673
  %v5678 = vand.u32 2147483647, %v5663
  %vm5679 = vcmp.eq.f32.partialorder %v5678, 8.507059e+37
  %v5680 = vand.u32 %v5663, 2147483648
  %v5681 = vor.u32 1.1754944e-38, %v5680
  %v5682 = vsel %vm5679, %v5681, %v5677
  %v5683 = vmul.f32 1.0, %v5682
  %v5684 = vrcp.pop %v5664
  %v5685 = vmul.f32 %v5664, %v5684
  %v5686 = vsub.f32 1.0, %v5685
  %v5687 = vmul.f32 %v5684, %v5686
  %v5688 = vadd.f32 %v5684, %v5687
  %vm5689 = vweird.f32 %v5664
  %vm5690 = vweird.f32 %v5684
  %vm5691 = vmor %vm5689, %vm5690
  %v5692 = vsel %vm5691, %v5684, %v5688
  %v5693 = vand.u32 2147483647, %v5664
  %vm5694 = vcmp.eq.f32.partialorder %v5693, 8.507059e+37
  %v5695 = vand.u32 %v5664, 2147483648
  %v5696 = vor.u32 1.1754944e-38, %v5695
  %v5697 = vsel %vm5694, %v5696, %v5692
  %v5698 = vmul.f32 1.0, %v5697
  %v5699 = vrcp.pop %v5665
  %v5700 = vmul.f32 %v5665, %v5699
  %v5701 = vsub.f32 1.0, %v5700
  %v5702 = vmul.f32 %v5699, %v5701
  %v5703 = vadd.f32 %v5699, %v5702
  %vm5704 = vweird.f32 %v5665
  %vm5705 = vweird.f32 %v5699
  %vm5706 = vmor %vm5704, %vm5705
  %v5707 = vsel %vm5706, %v5699, %v5703
  %v5708 = vand.u32 2147483647, %v5665
  %vm5709 = vcmp.eq.f32.partialorder %v5708, 8.507059e+37
  %v5710 = vand.u32 %v5665, 2147483648
  %v5711 = vor.u32 1.1754944e-38, %v5710
  %v5712 = vsel %vm5709, %v5711, %v5707
  %v5713 = vmul.f32 1.0, %v5712
  %v5714 = vrcp.pop %v5666
  %v5715 = vmul.f32 %v5666, %v5714
  %v5716 = vsub.f32 1.0, %v5715
  %v5717 = vmul.f32 %v5714, %v5716
  %v5718 = vadd.f32 %v5714, %v5717
  %vm5719 = vweird.f32 %v5666
  %vm5720 = vweird.f32 %v5714
  %vm5721 = vmor %vm5719, %vm5720
  %v5722 = vsel %vm5721, %v5714, %v5718
  %v5723 = vand.u32 2147483647, %v5666
  %vm5724 = vcmp.eq.f32.partialorder %v5723, 8.507059e+37
  %v5725 = vand.u32 %v5666, 2147483648
  %v5726 = vor.u32 1.1754944e-38, %v5725
  %v5727 = vsel %vm5724, %v5726, %v5722
  %v5728 = vmul.f32 1.0, %v5727
  %v5729 = vrcp.pop %v5667
  %v5730 = vmul.f32 %v5667, %v5729
  %v5731 = vsub.f32 1.0, %v5730
  %v5732 = vmul.f32 %v5729, %v5731
  %v5733 = vadd.f32 %v5729, %v5732
  %vm5734 = vweird.f32 %v5667
  %vm5735 = vweird.f32 %v5729
  %vm5736 = vmor %vm5734, %vm5735
  %v5737 = vsel %vm5736, %v5729, %v5733
  %v5738 = vand.u32 2147483647, %v5667
  %vm5739 = vcmp.eq.f32.partialorder %v5738, 8.507059e+37
  %v5740 = vand.u32 %v5667, 2147483648
  %v5741 = vor.u32 1.1754944e-38, %v5740
  %v5742 = vsel %vm5739, %v5741, %v5737
  %v5743 = vmul.f32 1.0, %v5742
  %v5744 = vrcp.pop %v5668
  %v5745 = vmul.f32 %v5668, %v5744
  %v5746 = vsub.f32 1.0, %v5745
  %v5747 = vmul.f32 %v5744, %v5746
  %v5748 = vadd.f32 %v5744, %v5747
  %vm5749 = vweird.f32 %v5668
  %vm5750 = vweird.f32 %v5744
  %vm5751 = vmor %vm5749, %vm5750
  %v5752 = vsel %vm5751, %v5744, %v5748
  %v5753 = vand.u32 2147483647, %v5668
  %vm5754 = vcmp.eq.f32.partialorder %v5753, 8.507059e+37
  %v5755 = vand.u32 %v5668, 2147483648
  %v5756 = vor.u32 1.1754944e-38, %v5755
  %v5757 = vsel %vm5754, %v5756, %v5752
  %v5758 = vmul.f32 1.0, %v5757
  %v5759 = vtanh.pop %v5643
  %v5760 = vtanh.pop %v5644
  %v5761 = vmul.f32 %v5713, %v4460
  %v5762 = vmul.f32 %v5728, %v4461
  %v5763 = vmul.f32 %v5683, %v5759
  %v5764 = vmul.f32 %v5698, %v5760
  %v5765 = vadd.f32 %v5761, %v5763
  %v5766 = vadd.f32 %v5762, %v5764
  %v5767 = vtanh.pop %v5765
  %v5768 = vtanh.pop %v5766
  %v5769 = vmul.f32 %v5743, %v5767
  %v5770 = vmul.f32 %v5758, %v5768
  %s5771 = scalar_lea.vmem [#allocation3], 48
  %5772 = vst [vmem:[%s5771] sm:$0xff] %v5769
  %5773 = vst [vmem:[%s5771 + $0x8] sm:$0xff] %v5770
  %s5774 = scalar_lea.vmem [#allocation4], 64
  %5775 = vst [vmem:[%s5774] sm:$0xff] %v5769
  %5776 = vst [vmem:[%s5774 + $0x8] sm:$0xff] %v5770
  %v5777 = vmul.f32 %v5769, %v555
  %v5778 = vmul.f32 %v5770, %v555
  %v5779 = vmul.f32 %v5769, %v560
  %v5780 = vmul.f32 %v5770, %v560
  %s5781 = scalar_lea.vmem [#allocation2], 256
  %v5782 = vld [vmem:[%s5781] sm:$0xff]
  %v5783 = vld [vmem:[%s5781 + $0x8] sm:$0xff]
  %v5784 = vld [vmem:[%s5781 + $0x10] sm:$0xff]
  %v5785 = vld [vmem:[%s5781 + $0x18] sm:$0xff]
  %v5786 = vld [vmem:[%s5781 + $0x20] sm:$0xff]
  %v5787 = vld [vmem:[%s5781 + $0x28] sm:$0xff]
  %v5788 = vld [vmem:[%s5781 + $0x30] sm:$0xff]
  %v5789 = vld [vmem:[%s5781 + $0x38] sm:$0xff]
  %v5790 = vld [vmem:[%s2] sm:$0xff]
  %v5791 = vld [vmem:[%s2 + $0x8] sm:$0xff]
  %v5792 = vld [vmem:[%s2 + $0x10] sm:$0xff]
  %v5793 = vld [vmem:[%s2 + $0x18] sm:$0xff]
  %v5794 = vld [vmem:[%s2 + $0x20] sm:$0xff]
  %v5795 = vld [vmem:[%s2 + $0x28] sm:$0xff]
  %v5796 = vld [vmem:[%s2 + $0x30] sm:$0xff]
  %v5797 = vld [vmem:[%s2 + $0x38] sm:$0xff]
  %v5798 = vld [vmem:[%s2 + $0x40] sm:$0xff]
  %v5799 = vld [vmem:[%s2 + $0x48] sm:$0xff]
  %v5800 = vld [vmem:[%s2 + $0x50] sm:$0xff]
  %v5801 = vld [vmem:[%s2 + $0x58] sm:$0xff]
  %v5802 = vld [vmem:[%s2 + $0x60] sm:$0xff]
  %v5803 = vld [vmem:[%s2 + $0x68] sm:$0xff]
  %v5804 = vld [vmem:[%s2 + $0x70] sm:$0xff]
  %v5805 = vld [vmem:[%s2 + $0x78] sm:$0xff]
  %v5806 = vld [vmem:[%s2 + $0x80] sm:$0xff]
  %v5807 = vld [vmem:[%s2 + $0x88] sm:$0xff]
  %v5808 = vld [vmem:[%s2 + $0x90] sm:$0xff]
  %v5809 = vld [vmem:[%s2 + $0x98] sm:$0xff]
  %v5810 = vld [vmem:[%s2 + $0xa0] sm:$0xff]
  %v5811 = vld [vmem:[%s2 + $0xa8] sm:$0xff]
  %v5812 = vld [vmem:[%s2 + $0xb0] sm:$0xff]
  %v5813 = vld [vmem:[%s2 + $0xb8] sm:$0xff]
  %v5814 = vld [vmem:[%s2 + $0xc0] sm:$0xff]
  %v5815 = vld [vmem:[%s2 + $0xc8] sm:$0xff]
  %v5816 = vld [vmem:[%s2 + $0xd0] sm:$0xff]
  %v5817 = vld [vmem:[%s2 + $0xd8] sm:$0xff]
  %v5818 = vld [vmem:[%s2 + $0xe0] sm:$0xff]
  %v5819 = vld [vmem:[%s2 + $0xe8] sm:$0xff]
  %v5820 = vld [vmem:[%s2 + $0xf0] sm:$0xff]
  %v5821 = vld [vmem:[%s2 + $0xf8] sm:$0xff]
  %v5822 = vld [vmem:[%s2 + $0x100] sm:$0xff]
  %v5823 = vld [vmem:[%s2 + $0x108] sm:$0xff]
  %v5824 = vld [vmem:[%s2 + $0x110] sm:$0xff]
  %v5825 = vld [vmem:[%s2 + $0x118] sm:$0xff]
  %v5826 = vld [vmem:[%s2 + $0x120] sm:$0xff]
  %v5827 = vld [vmem:[%s2 + $0x128] sm:$0xff]
  %v5828 = vld [vmem:[%s2 + $0x130] sm:$0xff]
  %v5829 = vld [vmem:[%s2 + $0x138] sm:$0xff]
  %v5830 = vld [vmem:[%s2 + $0x140] sm:$0xff]
  %v5831 = vld [vmem:[%s2 + $0x148] sm:$0xff]
  %v5832 = vld [vmem:[%s2 + $0x150] sm:$0xff]
  %v5833 = vld [vmem:[%s2 + $0x158] sm:$0xff]
  %v5834 = vld [vmem:[%s2 + $0x160] sm:$0xff]
  %v5835 = vld [vmem:[%s2 + $0x168] sm:$0xff]
  %v5836 = vld [vmem:[%s2 + $0x170] sm:$0xff]
  %v5837 = vld [vmem:[%s2 + $0x178] sm:$0xff]
  %v5838 = vld [vmem:[%s2 + $0x180] sm:$0xff]
  %v5839 = vld [vmem:[%s2 + $0x188] sm:$0xff]
  %v5840 = vld [vmem:[%s2 + $0x190] sm:$0xff]
  %v5841 = vld [vmem:[%s2 + $0x198] sm:$0xff]
  %v5842 = vld [vmem:[%s2 + $0x1a0] sm:$0xff]
  %v5843 = vld [vmem:[%s2 + $0x1a8] sm:$0xff]
  %v5844 = vld [vmem:[%s2 + $0x1b0] sm:$0xff]
  %v5845 = vld [vmem:[%s2 + $0x1b8] sm:$0xff]
  %v5846 = vld [vmem:[%s2 + $0x1c0] sm:$0xff]
  %v5847 = vld [vmem:[%s2 + $0x1c8] sm:$0xff]
  %v5848 = vld [vmem:[%s2 + $0x1d0] sm:$0xff]
  %v5849 = vld [vmem:[%s2 + $0x1d8] sm:$0xff]
  %v5850 = vld [vmem:[%s2 + $0x1e0] sm:$0xff]
  %v5851 = vld [vmem:[%s2 + $0x1e8] sm:$0xff]
  %v5852 = vld [vmem:[%s2 + $0x1f0] sm:$0xff]
  %v5853 = vld [vmem:[%s2 + $0x1f8] sm:$0xff]
  %v5854 = vld [vmem:[%s2 + $0x200] sm:$0xff]
  %v5855 = vld [vmem:[%s2 + $0x208] sm:$0xff]
  %v5856 = vld [vmem:[%s2 + $0x210] sm:$0xff]
  %v5857 = vld [vmem:[%s2 + $0x218] sm:$0xff]
  %v5858 = vld [vmem:[%s2 + $0x220] sm:$0xff]
  %v5859 = vld [vmem:[%s2 + $0x228] sm:$0xff]
  %v5860 = vld [vmem:[%s2 + $0x230] sm:$0xff]
  %v5861 = vld [vmem:[%s2 + $0x238] sm:$0xff]
  %v5862 = vld [vmem:[%s2 + $0x240] sm:$0xff]
  %v5863 = vld [vmem:[%s2 + $0x248] sm:$0xff]
  %v5864 = vld [vmem:[%s2 + $0x250] sm:$0xff]
  %v5865 = vld [vmem:[%s2 + $0x258] sm:$0xff]
  %v5866 = vld [vmem:[%s2 + $0x260] sm:$0xff]
  %v5867 = vld [vmem:[%s2 + $0x268] sm:$0xff]
  %v5868 = vld [vmem:[%s2 + $0x270] sm:$0xff]
  %v5869 = vld [vmem:[%s2 + $0x278] sm:$0xff]
  %v5870 = vld [vmem:[%s2 + $0x280] sm:$0xff]
  %v5871 = vld [vmem:[%s2 + $0x288] sm:$0xff]
  %v5872 = vld [vmem:[%s2 + $0x290] sm:$0xff]
  %v5873 = vld [vmem:[%s2 + $0x298] sm:$0xff]
  %v5874 = vld [vmem:[%s2 + $0x2a0] sm:$0xff]
  %v5875 = vld [vmem:[%s2 + $0x2a8] sm:$0xff]
  %v5876 = vld [vmem:[%s2 + $0x2b0] sm:$0xff]
  %v5877 = vld [vmem:[%s2 + $0x2b8] sm:$0xff]
  %v5878 = vld [vmem:[%s2 + $0x2c0] sm:$0xff]
  %v5879 = vld [vmem:[%s2 + $0x2c8] sm:$0xff]
  %v5880 = vld [vmem:[%s2 + $0x2d0] sm:$0xff]
  %v5881 = vld [vmem:[%s2 + $0x2d8] sm:$0xff]
  %v5882 = vld [vmem:[%s2 + $0x2e0] sm:$0xff]
  %v5883 = vld [vmem:[%s2 + $0x2e8] sm:$0xff]
  %v5884 = vld [vmem:[%s2 + $0x2f0] sm:$0xff]
  %v5885 = vld [vmem:[%s2 + $0x2f8] sm:$0xff]
  %v5886 = vld [vmem:[%s2 + $0x300] sm:$0xff]
  %v5887 = vld [vmem:[%s2 + $0x308] sm:$0xff]
  %v5888 = vld [vmem:[%s2 + $0x310] sm:$0xff]
  %v5889 = vld [vmem:[%s2 + $0x318] sm:$0xff]
  %v5890 = vld [vmem:[%s2 + $0x320] sm:$0xff]
  %v5891 = vld [vmem:[%s2 + $0x328] sm:$0xff]
  %v5892 = vld [vmem:[%s2 + $0x330] sm:$0xff]
  %v5893 = vld [vmem:[%s2 + $0x338] sm:$0xff]
  %v5894 = vld [vmem:[%s2 + $0x340] sm:$0xff]
  %v5895 = vld [vmem:[%s2 + $0x348] sm:$0xff]
  %v5896 = vld [vmem:[%s2 + $0x350] sm:$0xff]
  %v5897 = vld [vmem:[%s2 + $0x358] sm:$0xff]
  %v5898 = vld [vmem:[%s2 + $0x360] sm:$0xff]
  %v5899 = vld [vmem:[%s2 + $0x368] sm:$0xff]
  %v5900 = vld [vmem:[%s2 + $0x370] sm:$0xff]
  %v5901 = vld [vmem:[%s2 + $0x378] sm:$0xff]
  %v5902 = vld [vmem:[%s2 + $0x380] sm:$0xff]
  %v5903 = vld [vmem:[%s2 + $0x388] sm:$0xff]
  %v5904 = vld [vmem:[%s2 + $0x390] sm:$0xff]
  %v5905 = vld [vmem:[%s2 + $0x398] sm:$0xff]
  %v5906 = vld [vmem:[%s2 + $0x3a0] sm:$0xff]
  %v5907 = vld [vmem:[%s2 + $0x3a8] sm:$0xff]
  %v5908 = vld [vmem:[%s2 + $0x3b0] sm:$0xff]
  %v5909 = vld [vmem:[%s2 + $0x3b8] sm:$0xff]
  %v5910 = vld [vmem:[%s2 + $0x3c0] sm:$0xff]
  %v5911 = vld [vmem:[%s2 + $0x3c8] sm:$0xff]
  %v5912 = vld [vmem:[%s2 + $0x3d0] sm:$0xff]
  %v5913 = vld [vmem:[%s2 + $0x3d8] sm:$0xff]
  %v5914 = vld [vmem:[%s2 + $0x3e0] sm:$0xff]
  %v5915 = vld [vmem:[%s2 + $0x3e8] sm:$0xff]
  %v5916 = vld [vmem:[%s2 + $0x3f0] sm:$0xff]
  %v5917 = vld [vmem:[%s2 + $0x3f8] sm:$0xff]
  %v5918 = vld [vmem:[%s2 + $0x400] sm:$0xff]
  %v5919 = vld [vmem:[%s2 + $0x408] sm:$0xff]
  %v5920 = vld [vmem:[%s2 + $0x410] sm:$0xff]
  %v5921 = vld [vmem:[%s2 + $0x418] sm:$0xff]
  %v5922 = vld [vmem:[%s2 + $0x420] sm:$0xff]
  %v5923 = vld [vmem:[%s2 + $0x428] sm:$0xff]
  %v5924 = vld [vmem:[%s2 + $0x430] sm:$0xff]
  %v5925 = vld [vmem:[%s2 + $0x438] sm:$0xff]
  %v5926 = vld [vmem:[%s2 + $0x440] sm:$0xff]
  %v5927 = vld [vmem:[%s2 + $0x448] sm:$0xff]
  %v5928 = vld [vmem:[%s2 + $0x450] sm:$0xff]
  %v5929 = vld [vmem:[%s2 + $0x458] sm:$0xff]
  %v5930 = vld [vmem:[%s2 + $0x460] sm:$0xff]
  %v5931 = vld [vmem:[%s2 + $0x468] sm:$0xff]
  %v5932 = vld [vmem:[%s2 + $0x470] sm:$0xff]
  %v5933 = vld [vmem:[%s2 + $0x478] sm:$0xff]
  %v5934 = vld [vmem:[%s2 + $0x480] sm:$0xff]
  %v5935 = vld [vmem:[%s2 + $0x488] sm:$0xff]
  %v5936 = vld [vmem:[%s2 + $0x490] sm:$0xff]
  %v5937 = vld [vmem:[%s2 + $0x498] sm:$0xff]
  %v5938 = vld [vmem:[%s2 + $0x4a0] sm:$0xff]
  %v5939 = vld [vmem:[%s2 + $0x4a8] sm:$0xff]
  %v5940 = vld [vmem:[%s2 + $0x4b0] sm:$0xff]
  %v5941 = vld [vmem:[%s2 + $0x4b8] sm:$0xff]
  %v5942 = vld [vmem:[%s2 + $0x4c0] sm:$0xff]
  %v5943 = vld [vmem:[%s2 + $0x4c8] sm:$0xff]
  %v5944 = vld [vmem:[%s2 + $0x4d0] sm:$0xff]
  %v5945 = vld [vmem:[%s2 + $0x4d8] sm:$0xff]
  %v5946 = vld [vmem:[%s2 + $0x4e0] sm:$0xff]
  %v5947 = vld [vmem:[%s2 + $0x4e8] sm:$0xff]
  %v5948 = vld [vmem:[%s2 + $0x4f0] sm:$0xff]
  %v5949 = vld [vmem:[%s2 + $0x4f8] sm:$0xff]
  %v5950 = vld [vmem:[%s2 + $0x500] sm:$0xff]
  %v5951 = vld [vmem:[%s2 + $0x508] sm:$0xff]
  %v5952 = vld [vmem:[%s2 + $0x510] sm:$0xff]
  %v5953 = vld [vmem:[%s2 + $0x518] sm:$0xff]
  %v5954 = vld [vmem:[%s2 + $0x520] sm:$0xff]
  %v5955 = vld [vmem:[%s2 + $0x528] sm:$0xff]
  %v5956 = vld [vmem:[%s2 + $0x530] sm:$0xff]
  %v5957 = vld [vmem:[%s2 + $0x538] sm:$0xff]
  %v5958 = vld [vmem:[%s2 + $0x540] sm:$0xff]
  %v5959 = vld [vmem:[%s2 + $0x548] sm:$0xff]
  %v5960 = vld [vmem:[%s2 + $0x550] sm:$0xff]
  %v5961 = vld [vmem:[%s2 + $0x558] sm:$0xff]
  %v5962 = vld [vmem:[%s2 + $0x560] sm:$0xff]
  %v5963 = vld [vmem:[%s2 + $0x568] sm:$0xff]
  %v5964 = vld [vmem:[%s2 + $0x570] sm:$0xff]
  %v5965 = vld [vmem:[%s2 + $0x578] sm:$0xff]
  %v5966 = vld [vmem:[%s2 + $0x580] sm:$0xff]
  %v5967 = vld [vmem:[%s2 + $0x588] sm:$0xff]
  %v5968 = vld [vmem:[%s2 + $0x590] sm:$0xff]
  %v5969 = vld [vmem:[%s2 + $0x598] sm:$0xff]
  %v5970 = vld [vmem:[%s2 + $0x5a0] sm:$0xff]
  %v5971 = vld [vmem:[%s2 + $0x5a8] sm:$0xff]
  %v5972 = vld [vmem:[%s2 + $0x5b0] sm:$0xff]
  %v5973 = vld [vmem:[%s2 + $0x5b8] sm:$0xff]
  %v5974 = vld [vmem:[%s2 + $0x5c0] sm:$0xff]
  %v5975 = vld [vmem:[%s2 + $0x5c8] sm:$0xff]
  %v5976 = vld [vmem:[%s2 + $0x5d0] sm:$0xff]
  %v5977 = vld [vmem:[%s2 + $0x5d8] sm:$0xff]
  %v5978 = vld [vmem:[%s2 + $0x5e0] sm:$0xff]
  %v5979 = vld [vmem:[%s2 + $0x5e8] sm:$0xff]
  %v5980 = vld [vmem:[%s2 + $0x5f0] sm:$0xff]
  %v5981 = vld [vmem:[%s2 + $0x5f8] sm:$0xff]
  %v5982 = vld [vmem:[%s2 + $0x600] sm:$0xff]
  %v5983 = vld [vmem:[%s2 + $0x608] sm:$0xff]
  %v5984 = vld [vmem:[%s2 + $0x610] sm:$0xff]
  %v5985 = vld [vmem:[%s2 + $0x618] sm:$0xff]
  %v5986 = vld [vmem:[%s2 + $0x620] sm:$0xff]
  %v5987 = vld [vmem:[%s2 + $0x628] sm:$0xff]
  %v5988 = vld [vmem:[%s2 + $0x630] sm:$0xff]
  %v5989 = vld [vmem:[%s2 + $0x638] sm:$0xff]
  %v5990 = vld [vmem:[%s2 + $0x640] sm:$0xff]
  %v5991 = vld [vmem:[%s2 + $0x648] sm:$0xff]
  %v5992 = vld [vmem:[%s2 + $0x650] sm:$0xff]
  %v5993 = vld [vmem:[%s2 + $0x658] sm:$0xff]
  %v5994 = vld [vmem:[%s2 + $0x660] sm:$0xff]
  %v5995 = vld [vmem:[%s2 + $0x668] sm:$0xff]
  %v5996 = vld [vmem:[%s2 + $0x670] sm:$0xff]
  %v5997 = vld [vmem:[%s2 + $0x678] sm:$0xff]
  %v5998 = vld [vmem:[%s2 + $0x680] sm:$0xff]
  %v5999 = vld [vmem:[%s2 + $0x688] sm:$0xff]
  %v6000 = vld [vmem:[%s2 + $0x690] sm:$0xff]
  %v6001 = vld [vmem:[%s2 + $0x698] sm:$0xff]
  %v6002 = vld [vmem:[%s2 + $0x6a0] sm:$0xff]
  %v6003 = vld [vmem:[%s2 + $0x6a8] sm:$0xff]
  %v6004 = vld [vmem:[%s2 + $0x6b0] sm:$0xff]
  %v6005 = vld [vmem:[%s2 + $0x6b8] sm:$0xff]
  %v6006 = vld [vmem:[%s2 + $0x6c0] sm:$0xff]
  %v6007 = vld [vmem:[%s2 + $0x6c8] sm:$0xff]
  %v6008 = vld [vmem:[%s2 + $0x6d0] sm:$0xff]
  %v6009 = vld [vmem:[%s2 + $0x6d8] sm:$0xff]
  %v6010 = vld [vmem:[%s2 + $0x6e0] sm:$0xff]
  %v6011 = vld [vmem:[%s2 + $0x6e8] sm:$0xff]
  %v6012 = vld [vmem:[%s2 + $0x6f0] sm:$0xff]
  %v6013 = vld [vmem:[%s2 + $0x6f8] sm:$0xff]
  %v6014 = vld [vmem:[%s2 + $0x700] sm:$0xff]
  %v6015 = vld [vmem:[%s2 + $0x708] sm:$0xff]
  %v6016 = vld [vmem:[%s2 + $0x710] sm:$0xff]
  %v6017 = vld [vmem:[%s2 + $0x718] sm:$0xff]
  %v6018 = vld [vmem:[%s2 + $0x720] sm:$0xff]
  %v6019 = vld [vmem:[%s2 + $0x728] sm:$0xff]
  %v6020 = vld [vmem:[%s2 + $0x730] sm:$0xff]
  %v6021 = vld [vmem:[%s2 + $0x738] sm:$0xff]
  %v6022 = vld [vmem:[%s2 + $0x740] sm:$0xff]
  %v6023 = vld [vmem:[%s2 + $0x748] sm:$0xff]
  %v6024 = vld [vmem:[%s2 + $0x750] sm:$0xff]
  %v6025 = vld [vmem:[%s2 + $0x758] sm:$0xff]
  %v6026 = vld [vmem:[%s2 + $0x760] sm:$0xff]
  %v6027 = vld [vmem:[%s2 + $0x768] sm:$0xff]
  %v6028 = vld [vmem:[%s2 + $0x770] sm:$0xff]
  %v6029 = vld [vmem:[%s2 + $0x778] sm:$0xff]
  %v6030 = vld [vmem:[%s2 + $0x780] sm:$0xff]
  %v6031 = vld [vmem:[%s2 + $0x788] sm:$0xff]
  %v6032 = vld [vmem:[%s2 + $0x790] sm:$0xff]
  %v6033 = vld [vmem:[%s2 + $0x798] sm:$0xff]
  %v6034 = vld [vmem:[%s2 + $0x7a0] sm:$0xff]
  %v6035 = vld [vmem:[%s2 + $0x7a8] sm:$0xff]
  %v6036 = vld [vmem:[%s2 + $0x7b0] sm:$0xff]
  %v6037 = vld [vmem:[%s2 + $0x7b8] sm:$0xff]
  %v6038 = vld [vmem:[%s2 + $0x7c0] sm:$0xff]
  %v6039 = vld [vmem:[%s2 + $0x7c8] sm:$0xff]
  %v6040 = vld [vmem:[%s2 + $0x7d0] sm:$0xff]
  %v6041 = vld [vmem:[%s2 + $0x7d8] sm:$0xff]
  %v6042 = vld [vmem:[%s2 + $0x7e0] sm:$0xff]
  %v6043 = vld [vmem:[%s2 + $0x7e8] sm:$0xff]
  %v6044 = vld [vmem:[%s2 + $0x7f0] sm:$0xff]
  %v6045 = vld [vmem:[%s2 + $0x7f8] sm:$0xff]
  %v6046 = vld [vmem:[%s2 + $0x800] sm:$0xff]
  %v6047 = vld [vmem:[%s2 + $0x808] sm:$0xff]
  %v6048 = vld [vmem:[%s2 + $0x810] sm:$0xff]
  %v6049 = vld [vmem:[%s2 + $0x818] sm:$0xff]
  %v6050 = vld [vmem:[%s2 + $0x820] sm:$0xff]
  %v6051 = vld [vmem:[%s2 + $0x828] sm:$0xff]
  %v6052 = vld [vmem:[%s2 + $0x830] sm:$0xff]
  %v6053 = vld [vmem:[%s2 + $0x838] sm:$0xff]
  %v6054 = vld [vmem:[%s2 + $0x840] sm:$0xff]
  %v6055 = vld [vmem:[%s2 + $0x848] sm:$0xff]
  %v6056 = vld [vmem:[%s2 + $0x850] sm:$0xff]
  %v6057 = vld [vmem:[%s2 + $0x858] sm:$0xff]
  %v6058 = vld [vmem:[%s2 + $0x860] sm:$0xff]
  %v6059 = vld [vmem:[%s2 + $0x868] sm:$0xff]
  %v6060 = vld [vmem:[%s2 + $0x870] sm:$0xff]
  %v6061 = vld [vmem:[%s2 + $0x878] sm:$0xff]
  %v6062 = vld [vmem:[%s2 + $0x880] sm:$0xff]
  %v6063 = vld [vmem:[%s2 + $0x888] sm:$0xff]
  %v6064 = vld [vmem:[%s2 + $0x890] sm:$0xff]
  %v6065 = vld [vmem:[%s2 + $0x898] sm:$0xff]
  %v6066 = vld [vmem:[%s2 + $0x8a0] sm:$0xff]
  %v6067 = vld [vmem:[%s2 + $0x8a8] sm:$0xff]
  %v6068 = vld [vmem:[%s2 + $0x8b0] sm:$0xff]
  %v6069 = vld [vmem:[%s2 + $0x8b8] sm:$0xff]
  %v6070 = vld [vmem:[%s2 + $0x8c0] sm:$0xff]
  %v6071 = vld [vmem:[%s2 + $0x8c8] sm:$0xff]
  %v6072 = vld [vmem:[%s2 + $0x8d0] sm:$0xff]
  %v6073 = vld [vmem:[%s2 + $0x8d8] sm:$0xff]
  %v6074 = vld [vmem:[%s2 + $0x8e0] sm:$0xff]
  %v6075 = vld [vmem:[%s2 + $0x8e8] sm:$0xff]
  %v6076 = vld [vmem:[%s2 + $0x8f0] sm:$0xff]
  %v6077 = vld [vmem:[%s2 + $0x8f8] sm:$0xff]
  %v6078 = vld [vmem:[%s2 + $0x900] sm:$0xff]
  %v6079 = vld [vmem:[%s2 + $0x908] sm:$0xff]
  %v6080 = vld [vmem:[%s2 + $0x910] sm:$0xff]
  %v6081 = vld [vmem:[%s2 + $0x918] sm:$0xff]
  %v6082 = vld [vmem:[%s2 + $0x920] sm:$0xff]
  %v6083 = vld [vmem:[%s2 + $0x928] sm:$0xff]
  %v6084 = vld [vmem:[%s2 + $0x930] sm:$0xff]
  %v6085 = vld [vmem:[%s2 + $0x938] sm:$0xff]
  %v6086 = vld [vmem:[%s2 + $0x940] sm:$0xff]
  %v6087 = vld [vmem:[%s2 + $0x948] sm:$0xff]
  %v6088 = vld [vmem:[%s2 + $0x950] sm:$0xff]
  %v6089 = vld [vmem:[%s2 + $0x958] sm:$0xff]
  %v6090 = vld [vmem:[%s2 + $0x960] sm:$0xff]
  %v6091 = vld [vmem:[%s2 + $0x968] sm:$0xff]
  %v6092 = vld [vmem:[%s2 + $0x970] sm:$0xff]
  %v6093 = vld [vmem:[%s2 + $0x978] sm:$0xff]
  %v6094 = vld [vmem:[%s2 + $0x980] sm:$0xff]
  %v6095 = vld [vmem:[%s2 + $0x988] sm:$0xff]
  %v6096 = vld [vmem:[%s2 + $0x990] sm:$0xff]
  %v6097 = vld [vmem:[%s2 + $0x998] sm:$0xff]
  %v6098 = vld [vmem:[%s2 + $0x9a0] sm:$0xff]
  %v6099 = vld [vmem:[%s2 + $0x9a8] sm:$0xff]
  %v6100 = vld [vmem:[%s2 + $0x9b0] sm:$0xff]
  %v6101 = vld [vmem:[%s2 + $0x9b8] sm:$0xff]
  %v6102 = vld [vmem:[%s2 + $0x9c0] sm:$0xff]
  %v6103 = vld [vmem:[%s2 + $0x9c8] sm:$0xff]
  %v6104 = vld [vmem:[%s2 + $0x9d0] sm:$0xff]
  %v6105 = vld [vmem:[%s2 + $0x9d8] sm:$0xff]
  %v6106 = vld [vmem:[%s2 + $0x9e0] sm:$0xff]
  %v6107 = vld [vmem:[%s2 + $0x9e8] sm:$0xff]
  %v6108 = vld [vmem:[%s2 + $0x9f0] sm:$0xff]
  %v6109 = vld [vmem:[%s2 + $0x9f8] sm:$0xff]
  %v6110 = vld [vmem:[%s2 + $0xa00] sm:$0xff]
  %v6111 = vld [vmem:[%s2 + $0xa08] sm:$0xff]
  %v6112 = vld [vmem:[%s2 + $0xa10] sm:$0xff]
  %v6113 = vld [vmem:[%s2 + $0xa18] sm:$0xff]
  %v6114 = vld [vmem:[%s2 + $0xa20] sm:$0xff]
  %v6115 = vld [vmem:[%s2 + $0xa28] sm:$0xff]
  %v6116 = vld [vmem:[%s2 + $0xa30] sm:$0xff]
  %v6117 = vld [vmem:[%s2 + $0xa38] sm:$0xff]
  %v6118 = vld [vmem:[%s2 + $0xa40] sm:$0xff]
  %v6119 = vld [vmem:[%s2 + $0xa48] sm:$0xff]
  %v6120 = vld [vmem:[%s2 + $0xa50] sm:$0xff]
  %v6121 = vld [vmem:[%s2 + $0xa58] sm:$0xff]
  %v6122 = vld [vmem:[%s2 + $0xa60] sm:$0xff]
  %v6123 = vld [vmem:[%s2 + $0xa68] sm:$0xff]
  %v6124 = vld [vmem:[%s2 + $0xa70] sm:$0xff]
  %v6125 = vld [vmem:[%s2 + $0xa78] sm:$0xff]
  %v6126 = vld [vmem:[%s2 + $0xa80] sm:$0xff]
  %v6127 = vld [vmem:[%s2 + $0xa88] sm:$0xff]
  %v6128 = vld [vmem:[%s2 + $0xa90] sm:$0xff]
  %v6129 = vld [vmem:[%s2 + $0xa98] sm:$0xff]
  %v6130 = vld [vmem:[%s2 + $0xaa0] sm:$0xff]
  %v6131 = vld [vmem:[%s2 + $0xaa8] sm:$0xff]
  %v6132 = vld [vmem:[%s2 + $0xab0] sm:$0xff]
  %v6133 = vld [vmem:[%s2 + $0xab8] sm:$0xff]
  %v6134 = vld [vmem:[%s2 + $0xac0] sm:$0xff]
  %v6135 = vld [vmem:[%s2 + $0xac8] sm:$0xff]
  %v6136 = vld [vmem:[%s2 + $0xad0] sm:$0xff]
  %v6137 = vld [vmem:[%s2 + $0xad8] sm:$0xff]
  %v6138 = vld [vmem:[%s2 + $0xae0] sm:$0xff]
  %v6139 = vld [vmem:[%s2 + $0xae8] sm:$0xff]
  %v6140 = vld [vmem:[%s2 + $0xaf0] sm:$0xff]
  %v6141 = vld [vmem:[%s2 + $0xaf8] sm:$0xff]
  %v6142 = vld [vmem:[%s2 + $0xb00] sm:$0xff]
  %v6143 = vld [vmem:[%s2 + $0xb08] sm:$0xff]
  %v6144 = vld [vmem:[%s2 + $0xb10] sm:$0xff]
  %v6145 = vld [vmem:[%s2 + $0xb18] sm:$0xff]
  %v6146 = vld [vmem:[%s2 + $0xb20] sm:$0xff]
  %v6147 = vld [vmem:[%s2 + $0xb28] sm:$0xff]
  %v6148 = vld [vmem:[%s2 + $0xb30] sm:$0xff]
  %v6149 = vld [vmem:[%s2 + $0xb38] sm:$0xff]
  %v6150 = vld [vmem:[%s2 + $0xb40] sm:$0xff]
  %v6151 = vld [vmem:[%s2 + $0xb48] sm:$0xff]
  %v6152 = vld [vmem:[%s2 + $0xb50] sm:$0xff]
  %v6153 = vld [vmem:[%s2 + $0xb58] sm:$0xff]
  %v6154 = vld [vmem:[%s2 + $0xb60] sm:$0xff]
  %v6155 = vld [vmem:[%s2 + $0xb68] sm:$0xff]
  %v6156 = vld [vmem:[%s2 + $0xb70] sm:$0xff]
  %v6157 = vld [vmem:[%s2 + $0xb78] sm:$0xff]
  %v6158 = vld [vmem:[%s2 + $0xb80] sm:$0xff]
  %v6159 = vld [vmem:[%s2 + $0xb88] sm:$0xff]
  %v6160 = vld [vmem:[%s2 + $0xb90] sm:$0xff]
  %v6161 = vld [vmem:[%s2 + $0xb98] sm:$0xff]
  %v6162 = vld [vmem:[%s2 + $0xba0] sm:$0xff]
  %v6163 = vld [vmem:[%s2 + $0xba8] sm:$0xff]
  %v6164 = vld [vmem:[%s2 + $0xbb0] sm:$0xff]
  %v6165 = vld [vmem:[%s2 + $0xbb8] sm:$0xff]
  %v6166 = vld [vmem:[%s2 + $0xbc0] sm:$0xff]
  %v6167 = vld [vmem:[%s2 + $0xbc8] sm:$0xff]
  %v6168 = vld [vmem:[%s2 + $0xbd0] sm:$0xff]
  %v6169 = vld [vmem:[%s2 + $0xbd8] sm:$0xff]
  %v6170 = vld [vmem:[%s2 + $0xbe0] sm:$0xff]
  %v6171 = vld [vmem:[%s2 + $0xbe8] sm:$0xff]
  %v6172 = vld [vmem:[%s2 + $0xbf0] sm:$0xff]
  %v6173 = vld [vmem:[%s2 + $0xbf8] sm:$0xff]
  %v6174 = vld [vmem:[%s2 + $0xc00] sm:$0xff]
  %v6175 = vld [vmem:[%s2 + $0xc08] sm:$0xff]
  %v6176 = vld [vmem:[%s2 + $0xc10] sm:$0xff]
  %v6177 = vld [vmem:[%s2 + $0xc18] sm:$0xff]
  %v6178 = vld [vmem:[%s2 + $0xc20] sm:$0xff]
  %v6179 = vld [vmem:[%s2 + $0xc28] sm:$0xff]
  %v6180 = vld [vmem:[%s2 + $0xc30] sm:$0xff]
  %v6181 = vld [vmem:[%s2 + $0xc38] sm:$0xff]
  %v6182 = vld [vmem:[%s2 + $0xc40] sm:$0xff]
  %v6183 = vld [vmem:[%s2 + $0xc48] sm:$0xff]
  %v6184 = vld [vmem:[%s2 + $0xc50] sm:$0xff]
  %v6185 = vld [vmem:[%s2 + $0xc58] sm:$0xff]
  %v6186 = vld [vmem:[%s2 + $0xc60] sm:$0xff]
  %v6187 = vld [vmem:[%s2 + $0xc68] sm:$0xff]
  %v6188 = vld [vmem:[%s2 + $0xc70] sm:$0xff]
  %v6189 = vld [vmem:[%s2 + $0xc78] sm:$0xff]
  %v6190 = vld [vmem:[%s2 + $0xc80] sm:$0xff]
  %v6191 = vld [vmem:[%s2 + $0xc88] sm:$0xff]
  %v6192 = vld [vmem:[%s2 + $0xc90] sm:$0xff]
  %v6193 = vld [vmem:[%s2 + $0xc98] sm:$0xff]
  %v6194 = vld [vmem:[%s2 + $0xca0] sm:$0xff]
  %v6195 = vld [vmem:[%s2 + $0xca8] sm:$0xff]
  %v6196 = vld [vmem:[%s2 + $0xcb0] sm:$0xff]
  %v6197 = vld [vmem:[%s2 + $0xcb8] sm:$0xff]
  %v6198 = vld [vmem:[%s2 + $0xcc0] sm:$0xff]
  %v6199 = vld [vmem:[%s2 + $0xcc8] sm:$0xff]
  %v6200 = vld [vmem:[%s2 + $0xcd0] sm:$0xff]
  %v6201 = vld [vmem:[%s2 + $0xcd8] sm:$0xff]
  %v6202 = vld [vmem:[%s2 + $0xce0] sm:$0xff]
  %v6203 = vld [vmem:[%s2 + $0xce8] sm:$0xff]
  %v6204 = vld [vmem:[%s2 + $0xcf0] sm:$0xff]
  %v6205 = vld [vmem:[%s2 + $0xcf8] sm:$0xff]
  %v6206 = vld [vmem:[%s2 + $0xd00] sm:$0xff]
  %v6207 = vld [vmem:[%s2 + $0xd08] sm:$0xff]
  %v6208 = vld [vmem:[%s2 + $0xd10] sm:$0xff]
  %v6209 = vld [vmem:[%s2 + $0xd18] sm:$0xff]
  %v6210 = vld [vmem:[%s2 + $0xd20] sm:$0xff]
  %v6211 = vld [vmem:[%s2 + $0xd28] sm:$0xff]
  %v6212 = vld [vmem:[%s2 + $0xd30] sm:$0xff]
  %v6213 = vld [vmem:[%s2 + $0xd38] sm:$0xff]
  %v6214 = vld [vmem:[%s2 + $0xd40] sm:$0xff]
  %v6215 = vld [vmem:[%s2 + $0xd48] sm:$0xff]
  %v6216 = vld [vmem:[%s2 + $0xd50] sm:$0xff]
  %v6217 = vld [vmem:[%s2 + $0xd58] sm:$0xff]
  %v6218 = vld [vmem:[%s2 + $0xd60] sm:$0xff]
  %v6219 = vld [vmem:[%s2 + $0xd68] sm:$0xff]
  %v6220 = vld [vmem:[%s2 + $0xd70] sm:$0xff]
  %v6221 = vld [vmem:[%s2 + $0xd78] sm:$0xff]
  %v6222 = vld [vmem:[%s2 + $0xd80] sm:$0xff]
  %v6223 = vld [vmem:[%s2 + $0xd88] sm:$0xff]
  %v6224 = vld [vmem:[%s2 + $0xd90] sm:$0xff]
  %v6225 = vld [vmem:[%s2 + $0xd98] sm:$0xff]
  %v6226 = vld [vmem:[%s2 + $0xda0] sm:$0xff]
  %v6227 = vld [vmem:[%s2 + $0xda8] sm:$0xff]
  %v6228 = vld [vmem:[%s2 + $0xdb0] sm:$0xff]
  %v6229 = vld [vmem:[%s2 + $0xdb8] sm:$0xff]
  %v6230 = vld [vmem:[%s2 + $0xdc0] sm:$0xff]
  %v6231 = vld [vmem:[%s2 + $0xdc8] sm:$0xff]
  %v6232 = vld [vmem:[%s2 + $0xdd0] sm:$0xff]
  %v6233 = vld [vmem:[%s2 + $0xdd8] sm:$0xff]
  %v6234 = vld [vmem:[%s2 + $0xde0] sm:$0xff]
  %v6235 = vld [vmem:[%s2 + $0xde8] sm:$0xff]
  %v6236 = vld [vmem:[%s2 + $0xdf0] sm:$0xff]
  %v6237 = vld [vmem:[%s2 + $0xdf8] sm:$0xff]
  %v6238 = vld [vmem:[%s2 + $0xe00] sm:$0xff]
  %v6239 = vld [vmem:[%s2 + $0xe08] sm:$0xff]
  %v6240 = vld [vmem:[%s2 + $0xe10] sm:$0xff]
  %v6241 = vld [vmem:[%s2 + $0xe18] sm:$0xff]
  %v6242 = vld [vmem:[%s2 + $0xe20] sm:$0xff]
  %v6243 = vld [vmem:[%s2 + $0xe28] sm:$0xff]
  %v6244 = vld [vmem:[%s2 + $0xe30] sm:$0xff]
  %v6245 = vld [vmem:[%s2 + $0xe38] sm:$0xff]
  %v6246 = vld [vmem:[%s2 + $0xe40] sm:$0xff]
  %v6247 = vld [vmem:[%s2 + $0xe48] sm:$0xff]
  %v6248 = vld [vmem:[%s2 + $0xe50] sm:$0xff]
  %v6249 = vld [vmem:[%s2 + $0xe58] sm:$0xff]
  %v6250 = vld [vmem:[%s2 + $0xe60] sm:$0xff]
  %v6251 = vld [vmem:[%s2 + $0xe68] sm:$0xff]
  %v6252 = vld [vmem:[%s2 + $0xe70] sm:$0xff]
  %v6253 = vld [vmem:[%s2 + $0xe78] sm:$0xff]
  %v6254 = vld [vmem:[%s2 + $0xe80] sm:$0xff]
  %v6255 = vld [vmem:[%s2 + $0xe88] sm:$0xff]
  %v6256 = vld [vmem:[%s2 + $0xe90] sm:$0xff]
  %v6257 = vld [vmem:[%s2 + $0xe98] sm:$0xff]
  %v6258 = vld [vmem:[%s2 + $0xea0] sm:$0xff]
  %v6259 = vld [vmem:[%s2 + $0xea8] sm:$0xff]
  %v6260 = vld [vmem:[%s2 + $0xeb0] sm:$0xff]
  %v6261 = vld [vmem:[%s2 + $0xeb8] sm:$0xff]
  %v6262 = vld [vmem:[%s2 + $0xec0] sm:$0xff]
  %v6263 = vld [vmem:[%s2 + $0xec8] sm:$0xff]
  %v6264 = vld [vmem:[%s2 + $0xed0] sm:$0xff]
  %v6265 = vld [vmem:[%s2 + $0xed8] sm:$0xff]
  %v6266 = vld [vmem:[%s2 + $0xee0] sm:$0xff]
  %v6267 = vld [vmem:[%s2 + $0xee8] sm:$0xff]
  %v6268 = vld [vmem:[%s2 + $0xef0] sm:$0xff]
  %v6269 = vld [vmem:[%s2 + $0xef8] sm:$0xff]
  %v6270 = vld [vmem:[%s2 + $0xf00] sm:$0xff]
  %v6271 = vld [vmem:[%s2 + $0xf08] sm:$0xff]
  %v6272 = vld [vmem:[%s2 + $0xf10] sm:$0xff]
  %v6273 = vld [vmem:[%s2 + $0xf18] sm:$0xff]
  %v6274 = vld [vmem:[%s2 + $0xf20] sm:$0xff]
  %v6275 = vld [vmem:[%s2 + $0xf28] sm:$0xff]
  %v6276 = vld [vmem:[%s2 + $0xf30] sm:$0xff]
  %v6277 = vld [vmem:[%s2 + $0xf38] sm:$0xff]
  %v6278 = vld [vmem:[%s2 + $0xf40] sm:$0xff]
  %v6279 = vld [vmem:[%s2 + $0xf48] sm:$0xff]
  %v6280 = vld [vmem:[%s2 + $0xf50] sm:$0xff]
  %v6281 = vld [vmem:[%s2 + $0xf58] sm:$0xff]
  %v6282 = vld [vmem:[%s2 + $0xf60] sm:$0xff]
  %v6283 = vld [vmem:[%s2 + $0xf68] sm:$0xff]
  %v6284 = vld [vmem:[%s2 + $0xf70] sm:$0xff]
  %v6285 = vld [vmem:[%s2 + $0xf78] sm:$0xff]
  %v6286 = vld [vmem:[%s2 + $0xf80] sm:$0xff]
  %v6287 = vld [vmem:[%s2 + $0xf88] sm:$0xff]
  %v6288 = vld [vmem:[%s2 + $0xf90] sm:$0xff]
  %v6289 = vld [vmem:[%s2 + $0xf98] sm:$0xff]
  %v6290 = vld [vmem:[%s2 + $0xfa0] sm:$0xff]
  %v6291 = vld [vmem:[%s2 + $0xfa8] sm:$0xff]
  %v6292 = vld [vmem:[%s2 + $0xfb0] sm:$0xff]
  %v6293 = vld [vmem:[%s2 + $0xfb8] sm:$0xff]
  %v6294 = vld [vmem:[%s2 + $0xfc0] sm:$0xff]
  %v6295 = vld [vmem:[%s2 + $0xfc8] sm:$0xff]
  %v6296 = vld [vmem:[%s2 + $0xfd0] sm:$0xff]
  %v6297 = vld [vmem:[%s2 + $0xfd8] sm:$0xff]
  %v6298 = vld [vmem:[%s2 + $0xfe0] sm:$0xff]
  %v6299 = vld [vmem:[%s2 + $0xfe8] sm:$0xff]
  %v6300 = vld [vmem:[%s2 + $0xff0] sm:$0xff]
  %v6301 = vld [vmem:[%s2 + $0xff8] sm:$0xff]
  %6302 = vmatpush.msra.mxu0 %v5910
  %6303 = vmatpush.msra.mxu0 %v5902
  %6304 = vmatpush.msra.mxu0 %v5894
  %6305 = vmatpush.msra.mxu0 %v5886
  %6306 = vmatpush.msra.mxu0 %v5878
  %6307 = vmatpush.msra.mxu0 %v5870
  %6308 = vmatpush.msra.mxu0 %v5862
  %6309 = vmatpush.msra.mxu0 %v5854
  %6310 = vmatpush.msra.mxu0 %v5846
  %6311 = vmatpush.msra.mxu0 %v5838
  %6312 = vmatpush.msra.mxu0 %v5830
  %6313 = vmatpush.msra.mxu0 %v5822
  %6314 = vmatpush.msra.mxu0 %v5814
  %6315 = vmatpush.msra.mxu0 %v5806
  %6316 = vmatpush.msra.mxu0 %v5798
  %6317 = vmatpush.msra.mxu0 %v5790
  %6318 = vmatmul.f32.gmra.mxu0 %v5777
  %v6319 = vpop.f32.mrf.mxu0
  %v6320 = vadd.f32 0.0, %v6319
  %6321 = vdwg.mxu0
  %6322 = vmatpush.msra.mxu0 %v6038
  %6323 = vmatpush.msra.mxu0 %v6030
  %6324 = vmatpush.msra.mxu0 %v6022
  %6325 = vmatpush.msra.mxu0 %v6014
  %6326 = vmatpush.msra.mxu0 %v6006
  %6327 = vmatpush.msra.mxu0 %v5998
  %6328 = vmatpush.msra.mxu0 %v5990
  %6329 = vmatpush.msra.mxu0 %v5982
  %6330 = vmatpush.msra.mxu0 %v5974
  %6331 = vmatpush.msra.mxu0 %v5966
  %6332 = vmatpush.msra.mxu0 %v5958
  %6333 = vmatpush.msra.mxu0 %v5950
  %6334 = vmatpush.msra.mxu0 %v5942
  %6335 = vmatpush.msra.mxu0 %v5934
  %6336 = vmatpush.msra.mxu0 %v5926
  %6337 = vmatpush.msra.mxu0 %v5918
  %6338 = vmatmul.f32.gmra.mxu0 %v5778
  %v6339 = vpop.f32.mrf.mxu0
  %v6340 = vadd.f32 %v6320, %v6339
  %6341 = vdwg.mxu0
  %6342 = vmatpush.msra.mxu0 %v6166
  %6343 = vmatpush.msra.mxu0 %v6158
  %6344 = vmatpush.msra.mxu0 %v6150
  %6345 = vmatpush.msra.mxu0 %v6142
  %6346 = vmatpush.msra.mxu0 %v6134
  %6347 = vmatpush.msra.mxu0 %v6126
  %6348 = vmatpush.msra.mxu0 %v6118
  %6349 = vmatpush.msra.mxu0 %v6110
  %6350 = vmatpush.msra.mxu0 %v6102
  %6351 = vmatpush.msra.mxu0 %v6094
  %6352 = vmatpush.msra.mxu0 %v6086
  %6353 = vmatpush.msra.mxu0 %v6078
  %6354 = vmatpush.msra.mxu0 %v6070
  %6355 = vmatpush.msra.mxu0 %v6062
  %6356 = vmatpush.msra.mxu0 %v6054
  %6357 = vmatpush.msra.mxu0 %v6046
  %6358 = vmatmul.f32.gmra.mxu0 %v5779
  %v6359 = vpop.f32.mrf.mxu0
  %v6360 = vadd.f32 %v6340, %v6359
  %6361 = vdwg.mxu0
  %6362 = vmatpush.msra.mxu0 %v6294
  %6363 = vmatpush.msra.mxu0 %v6286
  %6364 = vmatpush.msra.mxu0 %v6278
  %6365 = vmatpush.msra.mxu0 %v6270
  %6366 = vmatpush.msra.mxu0 %v6262
  %6367 = vmatpush.msra.mxu0 %v6254
  %6368 = vmatpush.msra.mxu0 %v6246
  %6369 = vmatpush.msra.mxu0 %v6238
  %6370 = vmatpush.msra.mxu0 %v6230
  %6371 = vmatpush.msra.mxu0 %v6222
  %6372 = vmatpush.msra.mxu0 %v6214
  %6373 = vmatpush.msra.mxu0 %v6206
  %6374 = vmatpush.msra.mxu0 %v6198
  %6375 = vmatpush.msra.mxu0 %v6190
  %6376 = vmatpush.msra.mxu0 %v6182
  %6377 = vmatpush.msra.mxu0 %v6174
  %6378 = vmatmul.f32.gmra.mxu0 %v5780
  %v6379 = vpop.f32.mrf.mxu0
  %v6380 = vadd.f32 %v6360, %v6379
  %6381 = vdwg.mxu0
  %6382 = vmatpush.msra.mxu0 %v5911
  %6383 = vmatpush.msra.mxu0 %v5903
  %6384 = vmatpush.msra.mxu0 %v5895
  %6385 = vmatpush.msra.mxu0 %v5887
  %6386 = vmatpush.msra.mxu0 %v5879
  %6387 = vmatpush.msra.mxu0 %v5871
  %6388 = vmatpush.msra.mxu0 %v5863
  %6389 = vmatpush.msra.mxu0 %v5855
  %6390 = vmatpush.msra.mxu0 %v5847
  %6391 = vmatpush.msra.mxu0 %v5839
  %6392 = vmatpush.msra.mxu0 %v5831
  %6393 = vmatpush.msra.mxu0 %v5823
  %6394 = vmatpush.msra.mxu0 %v5815
  %6395 = vmatpush.msra.mxu0 %v5807
  %6396 = vmatpush.msra.mxu0 %v5799
  %6397 = vmatpush.msra.mxu0 %v5791
  %6398 = vmatmul.f32.gmra.mxu0 %v5777
  %v6399 = vpop.f32.mrf.mxu0
  %v6400 = vadd.f32 0.0, %v6399
  %6401 = vdwg.mxu0
  %6402 = vmatpush.msra.mxu0 %v6039
  %6403 = vmatpush.msra.mxu0 %v6031
  %6404 = vmatpush.msra.mxu0 %v6023
  %6405 = vmatpush.msra.mxu0 %v6015
  %6406 = vmatpush.msra.mxu0 %v6007
  %6407 = vmatpush.msra.mxu0 %v5999
  %6408 = vmatpush.msra.mxu0 %v5991
  %6409 = vmatpush.msra.mxu0 %v5983
  %6410 = vmatpush.msra.mxu0 %v5975
  %6411 = vmatpush.msra.mxu0 %v5967
  %6412 = vmatpush.msra.mxu0 %v5959
  %6413 = vmatpush.msra.mxu0 %v5951
  %6414 = vmatpush.msra.mxu0 %v5943
  %6415 = vmatpush.msra.mxu0 %v5935
  %6416 = vmatpush.msra.mxu0 %v5927
  %6417 = vmatpush.msra.mxu0 %v5919
  %6418 = vmatmul.f32.gmra.mxu0 %v5778
  %v6419 = vpop.f32.mrf.mxu0
  %v6420 = vadd.f32 %v6400, %v6419
  %6421 = vdwg.mxu0
  %6422 = vmatpush.msra.mxu0 %v6167
  %6423 = vmatpush.msra.mxu0 %v6159
  %6424 = vmatpush.msra.mxu0 %v6151
  %6425 = vmatpush.msra.mxu0 %v6143
  %6426 = vmatpush.msra.mxu0 %v6135
  %6427 = vmatpush.msra.mxu0 %v6127
  %6428 = vmatpush.msra.mxu0 %v6119
  %6429 = vmatpush.msra.mxu0 %v6111
  %6430 = vmatpush.msra.mxu0 %v6103
  %6431 = vmatpush.msra.mxu0 %v6095
  %6432 = vmatpush.msra.mxu0 %v6087
  %6433 = vmatpush.msra.mxu0 %v6079
  %6434 = vmatpush.msra.mxu0 %v6071
  %6435 = vmatpush.msra.mxu0 %v6063
  %6436 = vmatpush.msra.mxu0 %v6055
  %6437 = vmatpush.msra.mxu0 %v6047
  %6438 = vmatmul.f32.gmra.mxu0 %v5779
  %v6439 = vpop.f32.mrf.mxu0
  %v6440 = vadd.f32 %v6420, %v6439
  %6441 = vdwg.mxu0
  %6442 = vmatpush.msra.mxu0 %v6295
  %6443 = vmatpush.msra.mxu0 %v6287
  %6444 = vmatpush.msra.mxu0 %v6279
  %6445 = vmatpush.msra.mxu0 %v6271
  %6446 = vmatpush.msra.mxu0 %v6263
  %6447 = vmatpush.msra.mxu0 %v6255
  %6448 = vmatpush.msra.mxu0 %v6247
  %6449 = vmatpush.msra.mxu0 %v6239
  %6450 = vmatpush.msra.mxu0 %v6231
  %6451 = vmatpush.msra.mxu0 %v6223
  %6452 = vmatpush.msra.mxu0 %v6215
  %6453 = vmatpush.msra.mxu0 %v6207
  %6454 = vmatpush.msra.mxu0 %v6199
  %6455 = vmatpush.msra.mxu0 %v6191
  %6456 = vmatpush.msra.mxu0 %v6183
  %6457 = vmatpush.msra.mxu0 %v6175
  %6458 = vmatmul.f32.gmra.mxu0 %v5780
  %v6459 = vpop.f32.mrf.mxu0
  %v6460 = vadd.f32 %v6440, %v6459
  %6461 = vdwg.mxu0
  %6462 = vmatpush.msra.mxu0 %v5912
  %6463 = vmatpush.msra.mxu0 %v5904
  %6464 = vmatpush.msra.mxu0 %v5896
  %6465 = vmatpush.msra.mxu0 %v5888
  %6466 = vmatpush.msra.mxu0 %v5880
  %6467 = vmatpush.msra.mxu0 %v5872
  %6468 = vmatpush.msra.mxu0 %v5864
  %6469 = vmatpush.msra.mxu0 %v5856
  %6470 = vmatpush.msra.mxu0 %v5848
  %6471 = vmatpush.msra.mxu0 %v5840
  %6472 = vmatpush.msra.mxu0 %v5832
  %6473 = vmatpush.msra.mxu0 %v5824
  %6474 = vmatpush.msra.mxu0 %v5816
  %6475 = vmatpush.msra.mxu0 %v5808
  %6476 = vmatpush.msra.mxu0 %v5800
  %6477 = vmatpush.msra.mxu0 %v5792
  %6478 = vmatmul.f32.gmra.mxu0 %v5777
  %v6479 = vpop.f32.mrf.mxu0
  %v6480 = vadd.f32 0.0, %v6479
  %6481 = vdwg.mxu0
  %6482 = vmatpush.msra.mxu0 %v6040
  %6483 = vmatpush.msra.mxu0 %v6032
  %6484 = vmatpush.msra.mxu0 %v6024
  %6485 = vmatpush.msra.mxu0 %v6016
  %6486 = vmatpush.msra.mxu0 %v6008
  %6487 = vmatpush.msra.mxu0 %v6000
  %6488 = vmatpush.msra.mxu0 %v5992
  %6489 = vmatpush.msra.mxu0 %v5984
  %6490 = vmatpush.msra.mxu0 %v5976
  %6491 = vmatpush.msra.mxu0 %v5968
  %6492 = vmatpush.msra.mxu0 %v5960
  %6493 = vmatpush.msra.mxu0 %v5952
  %6494 = vmatpush.msra.mxu0 %v5944
  %6495 = vmatpush.msra.mxu0 %v5936
  %6496 = vmatpush.msra.mxu0 %v5928
  %6497 = vmatpush.msra.mxu0 %v5920
  %6498 = vmatmul.f32.gmra.mxu0 %v5778
  %v6499 = vpop.f32.mrf.mxu0
  %v6500 = vadd.f32 %v6480, %v6499
  %6501 = vdwg.mxu0
  %6502 = vmatpush.msra.mxu0 %v6168
  %6503 = vmatpush.msra.mxu0 %v6160
  %6504 = vmatpush.msra.mxu0 %v6152
  %6505 = vmatpush.msra.mxu0 %v6144
  %6506 = vmatpush.msra.mxu0 %v6136
  %6507 = vmatpush.msra.mxu0 %v6128
  %6508 = vmatpush.msra.mxu0 %v6120
  %6509 = vmatpush.msra.mxu0 %v6112
  %6510 = vmatpush.msra.mxu0 %v6104
  %6511 = vmatpush.msra.mxu0 %v6096
  %6512 = vmatpush.msra.mxu0 %v6088
  %6513 = vmatpush.msra.mxu0 %v6080
  %6514 = vmatpush.msra.mxu0 %v6072
  %6515 = vmatpush.msra.mxu0 %v6064
  %6516 = vmatpush.msra.mxu0 %v6056
  %6517 = vmatpush.msra.mxu0 %v6048
  %6518 = vmatmul.f32.gmra.mxu0 %v5779
  %v6519 = vpop.f32.mrf.mxu0
  %v6520 = vadd.f32 %v6500, %v6519
  %6521 = vdwg.mxu0
  %6522 = vmatpush.msra.mxu0 %v6296
  %6523 = vmatpush.msra.mxu0 %v6288
  %6524 = vmatpush.msra.mxu0 %v6280
  %6525 = vmatpush.msra.mxu0 %v6272
  %6526 = vmatpush.msra.mxu0 %v6264
  %6527 = vmatpush.msra.mxu0 %v6256
  %6528 = vmatpush.msra.mxu0 %v6248
  %6529 = vmatpush.msra.mxu0 %v6240
  %6530 = vmatpush.msra.mxu0 %v6232
  %6531 = vmatpush.msra.mxu0 %v6224
  %6532 = vmatpush.msra.mxu0 %v6216
  %6533 = vmatpush.msra.mxu0 %v6208
  %6534 = vmatpush.msra.mxu0 %v6200
  %6535 = vmatpush.msra.mxu0 %v6192
  %6536 = vmatpush.msra.mxu0 %v6184
  %6537 = vmatpush.msra.mxu0 %v6176
  %6538 = vmatmul.f32.gmra.mxu0 %v5780
  %v6539 = vpop.f32.mrf.mxu0
  %v6540 = vadd.f32 %v6520, %v6539
  %6541 = vdwg.mxu0
  %6542 = vmatpush.msra.mxu0 %v5913
  %6543 = vmatpush.msra.mxu0 %v5905
  %6544 = vmatpush.msra.mxu0 %v5897
  %6545 = vmatpush.msra.mxu0 %v5889
  %6546 = vmatpush.msra.mxu0 %v5881
  %6547 = vmatpush.msra.mxu0 %v5873
  %6548 = vmatpush.msra.mxu0 %v5865
  %6549 = vmatpush.msra.mxu0 %v5857
  %6550 = vmatpush.msra.mxu0 %v5849
  %6551 = vmatpush.msra.mxu0 %v5841
  %6552 = vmatpush.msra.mxu0 %v5833
  %6553 = vmatpush.msra.mxu0 %v5825
  %6554 = vmatpush.msra.mxu0 %v5817
  %6555 = vmatpush.msra.mxu0 %v5809
  %6556 = vmatpush.msra.mxu0 %v5801
  %6557 = vmatpush.msra.mxu0 %v5793
  %6558 = vmatmul.f32.gmra.mxu0 %v5777
  %v6559 = vpop.f32.mrf.mxu0
  %v6560 = vadd.f32 0.0, %v6559
  %6561 = vdwg.mxu0
  %6562 = vmatpush.msra.mxu0 %v6041
  %6563 = vmatpush.msra.mxu0 %v6033
  %6564 = vmatpush.msra.mxu0 %v6025
  %6565 = vmatpush.msra.mxu0 %v6017
  %6566 = vmatpush.msra.mxu0 %v6009
  %6567 = vmatpush.msra.mxu0 %v6001
  %6568 = vmatpush.msra.mxu0 %v5993
  %6569 = vmatpush.msra.mxu0 %v5985
  %6570 = vmatpush.msra.mxu0 %v5977
  %6571 = vmatpush.msra.mxu0 %v5969
  %6572 = vmatpush.msra.mxu0 %v5961
  %6573 = vmatpush.msra.mxu0 %v5953
  %6574 = vmatpush.msra.mxu0 %v5945
  %6575 = vmatpush.msra.mxu0 %v5937
  %6576 = vmatpush.msra.mxu0 %v5929
  %6577 = vmatpush.msra.mxu0 %v5921
  %6578 = vmatmul.f32.gmra.mxu0 %v5778
  %v6579 = vpop.f32.mrf.mxu0
  %v6580 = vadd.f32 %v6560, %v6579
  %6581 = vdwg.mxu0
  %6582 = vmatpush.msra.mxu0 %v6169
  %6583 = vmatpush.msra.mxu0 %v6161
  %6584 = vmatpush.msra.mxu0 %v6153
  %6585 = vmatpush.msra.mxu0 %v6145
  %6586 = vmatpush.msra.mxu0 %v6137
  %6587 = vmatpush.msra.mxu0 %v6129
  %6588 = vmatpush.msra.mxu0 %v6121
  %6589 = vmatpush.msra.mxu0 %v6113
  %6590 = vmatpush.msra.mxu0 %v6105
  %6591 = vmatpush.msra.mxu0 %v6097
  %6592 = vmatpush.msra.mxu0 %v6089
  %6593 = vmatpush.msra.mxu0 %v6081
  %6594 = vmatpush.msra.mxu0 %v6073
  %6595 = vmatpush.msra.mxu0 %v6065
  %6596 = vmatpush.msra.mxu0 %v6057
  %6597 = vmatpush.msra.mxu0 %v6049
  %6598 = vmatmul.f32.gmra.mxu0 %v5779
  %v6599 = vpop.f32.mrf.mxu0
  %v6600 = vadd.f32 %v6580, %v6599
  %6601 = vdwg.mxu0
  %6602 = vmatpush.msra.mxu0 %v6297
  %6603 = vmatpush.msra.mxu0 %v6289
  %6604 = vmatpush.msra.mxu0 %v6281
  %6605 = vmatpush.msra.mxu0 %v6273
  %6606 = vmatpush.msra.mxu0 %v6265
  %6607 = vmatpush.msra.mxu0 %v6257
  %6608 = vmatpush.msra.mxu0 %v6249
  %6609 = vmatpush.msra.mxu0 %v6241
  %6610 = vmatpush.msra.mxu0 %v6233
  %6611 = vmatpush.msra.mxu0 %v6225
  %6612 = vmatpush.msra.mxu0 %v6217
  %6613 = vmatpush.msra.mxu0 %v6209
  %6614 = vmatpush.msra.mxu0 %v6201
  %6615 = vmatpush.msra.mxu0 %v6193
  %6616 = vmatpush.msra.mxu0 %v6185
  %6617 = vmatpush.msra.mxu0 %v6177
  %6618 = vmatmul.f32.gmra.mxu0 %v5780
  %v6619 = vpop.f32.mrf.mxu0
  %v6620 = vadd.f32 %v6600, %v6619
  %6621 = vdwg.mxu0
  %6622 = vmatpush.msra.mxu0 %v5914
  %6623 = vmatpush.msra.mxu0 %v5906
  %6624 = vmatpush.msra.mxu0 %v5898
  %6625 = vmatpush.msra.mxu0 %v5890
  %6626 = vmatpush.msra.mxu0 %v5882
  %6627 = vmatpush.msra.mxu0 %v5874
  %6628 = vmatpush.msra.mxu0 %v5866
  %6629 = vmatpush.msra.mxu0 %v5858
  %6630 = vmatpush.msra.mxu0 %v5850
  %6631 = vmatpush.msra.mxu0 %v5842
  %6632 = vmatpush.msra.mxu0 %v5834
  %6633 = vmatpush.msra.mxu0 %v5826
  %6634 = vmatpush.msra.mxu0 %v5818
  %6635 = vmatpush.msra.mxu0 %v5810
  %6636 = vmatpush.msra.mxu0 %v5802
  %6637 = vmatpush.msra.mxu0 %v5794
  %6638 = vmatmul.f32.gmra.mxu0 %v5777
  %v6639 = vpop.f32.mrf.mxu0
  %v6640 = vadd.f32 0.0, %v6639
  %6641 = vdwg.mxu0
  %6642 = vmatpush.msra.mxu0 %v6042
  %6643 = vmatpush.msra.mxu0 %v6034
  %6644 = vmatpush.msra.mxu0 %v6026
  %6645 = vmatpush.msra.mxu0 %v6018
  %6646 = vmatpush.msra.mxu0 %v6010
  %6647 = vmatpush.msra.mxu0 %v6002
  %6648 = vmatpush.msra.mxu0 %v5994
  %6649 = vmatpush.msra.mxu0 %v5986
  %6650 = vmatpush.msra.mxu0 %v5978
  %6651 = vmatpush.msra.mxu0 %v5970
  %6652 = vmatpush.msra.mxu0 %v5962
  %6653 = vmatpush.msra.mxu0 %v5954
  %6654 = vmatpush.msra.mxu0 %v5946
  %6655 = vmatpush.msra.mxu0 %v5938
  %6656 = vmatpush.msra.mxu0 %v5930
  %6657 = vmatpush.msra.mxu0 %v5922
  %6658 = vmatmul.f32.gmra.mxu0 %v5778
  %v6659 = vpop.f32.mrf.mxu0
  %v6660 = vadd.f32 %v6640, %v6659
  %6661 = vdwg.mxu0
  %6662 = vmatpush.msra.mxu0 %v6170
  %6663 = vmatpush.msra.mxu0 %v6162
  %6664 = vmatpush.msra.mxu0 %v6154
  %6665 = vmatpush.msra.mxu0 %v6146
  %6666 = vmatpush.msra.mxu0 %v6138
  %6667 = vmatpush.msra.mxu0 %v6130
  %6668 = vmatpush.msra.mxu0 %v6122
  %6669 = vmatpush.msra.mxu0 %v6114
  %6670 = vmatpush.msra.mxu0 %v6106
  %6671 = vmatpush.msra.mxu0 %v6098
  %6672 = vmatpush.msra.mxu0 %v6090
  %6673 = vmatpush.msra.mxu0 %v6082
  %6674 = vmatpush.msra.mxu0 %v6074
  %6675 = vmatpush.msra.mxu0 %v6066
  %6676 = vmatpush.msra.mxu0 %v6058
  %6677 = vmatpush.msra.mxu0 %v6050
  %6678 = vmatmul.f32.gmra.mxu0 %v5779
  %v6679 = vpop.f32.mrf.mxu0
  %v6680 = vadd.f32 %v6660, %v6679
  %6681 = vdwg.mxu0
  %6682 = vmatpush.msra.mxu0 %v6298
  %6683 = vmatpush.msra.mxu0 %v6290
  %6684 = vmatpush.msra.mxu0 %v6282
  %6685 = vmatpush.msra.mxu0 %v6274
  %6686 = vmatpush.msra.mxu0 %v6266
  %6687 = vmatpush.msra.mxu0 %v6258
  %6688 = vmatpush.msra.mxu0 %v6250
  %6689 = vmatpush.msra.mxu0 %v6242
  %6690 = vmatpush.msra.mxu0 %v6234
  %6691 = vmatpush.msra.mxu0 %v6226
  %6692 = vmatpush.msra.mxu0 %v6218
  %6693 = vmatpush.msra.mxu0 %v6210
  %6694 = vmatpush.msra.mxu0 %v6202
  %6695 = vmatpush.msra.mxu0 %v6194
  %6696 = vmatpush.msra.mxu0 %v6186
  %6697 = vmatpush.msra.mxu0 %v6178
  %6698 = vmatmul.f32.gmra.mxu0 %v5780
  %v6699 = vpop.f32.mrf.mxu0
  %v6700 = vadd.f32 %v6680, %v6699
  %6701 = vdwg.mxu0
  %6702 = vmatpush.msra.mxu0 %v5915
  %6703 = vmatpush.msra.mxu0 %v5907
  %6704 = vmatpush.msra.mxu0 %v5899
  %6705 = vmatpush.msra.mxu0 %v5891
  %6706 = vmatpush.msra.mxu0 %v5883
  %6707 = vmatpush.msra.mxu0 %v5875
  %6708 = vmatpush.msra.mxu0 %v5867
  %6709 = vmatpush.msra.mxu0 %v5859
  %6710 = vmatpush.msra.mxu0 %v5851
  %6711 = vmatpush.msra.mxu0 %v5843
  %6712 = vmatpush.msra.mxu0 %v5835
  %6713 = vmatpush.msra.mxu0 %v5827
  %6714 = vmatpush.msra.mxu0 %v5819
  %6715 = vmatpush.msra.mxu0 %v5811
  %6716 = vmatpush.msra.mxu0 %v5803
  %6717 = vmatpush.msra.mxu0 %v5795
  %6718 = vmatmul.f32.gmra.mxu0 %v5777
  %v6719 = vpop.f32.mrf.mxu0
  %v6720 = vadd.f32 0.0, %v6719
  %6721 = vdwg.mxu0
  %6722 = vmatpush.msra.mxu0 %v6043
  %6723 = vmatpush.msra.mxu0 %v6035
  %6724 = vmatpush.msra.mxu0 %v6027
  %6725 = vmatpush.msra.mxu0 %v6019
  %6726 = vmatpush.msra.mxu0 %v6011
  %6727 = vmatpush.msra.mxu0 %v6003
  %6728 = vmatpush.msra.mxu0 %v5995
  %6729 = vmatpush.msra.mxu0 %v5987
  %6730 = vmatpush.msra.mxu0 %v5979
  %6731 = vmatpush.msra.mxu0 %v5971
  %6732 = vmatpush.msra.mxu0 %v5963
  %6733 = vmatpush.msra.mxu0 %v5955
  %6734 = vmatpush.msra.mxu0 %v5947
  %6735 = vmatpush.msra.mxu0 %v5939
  %6736 = vmatpush.msra.mxu0 %v5931
  %6737 = vmatpush.msra.mxu0 %v5923
  %6738 = vmatmul.f32.gmra.mxu0 %v5778
  %v6739 = vpop.f32.mrf.mxu0
  %v6740 = vadd.f32 %v6720, %v6739
  %6741 = vdwg.mxu0
  %6742 = vmatpush.msra.mxu0 %v6171
  %6743 = vmatpush.msra.mxu0 %v6163
  %6744 = vmatpush.msra.mxu0 %v6155
  %6745 = vmatpush.msra.mxu0 %v6147
  %6746 = vmatpush.msra.mxu0 %v6139
  %6747 = vmatpush.msra.mxu0 %v6131
  %6748 = vmatpush.msra.mxu0 %v6123
  %6749 = vmatpush.msra.mxu0 %v6115
  %6750 = vmatpush.msra.mxu0 %v6107
  %6751 = vmatpush.msra.mxu0 %v6099
  %6752 = vmatpush.msra.mxu0 %v6091
  %6753 = vmatpush.msra.mxu0 %v6083
  %6754 = vmatpush.msra.mxu0 %v6075
  %6755 = vmatpush.msra.mxu0 %v6067
  %6756 = vmatpush.msra.mxu0 %v6059
  %6757 = vmatpush.msra.mxu0 %v6051
  %6758 = vmatmul.f32.gmra.mxu0 %v5779
  %v6759 = vpop.f32.mrf.mxu0
  %v6760 = vadd.f32 %v6740, %v6759
  %6761 = vdwg.mxu0
  %6762 = vmatpush.msra.mxu0 %v6299
  %6763 = vmatpush.msra.mxu0 %v6291
  %6764 = vmatpush.msra.mxu0 %v6283
  %6765 = vmatpush.msra.mxu0 %v6275
  %6766 = vmatpush.msra.mxu0 %v6267
  %6767 = vmatpush.msra.mxu0 %v6259
  %6768 = vmatpush.msra.mxu0 %v6251
  %6769 = vmatpush.msra.mxu0 %v6243
  %6770 = vmatpush.msra.mxu0 %v6235
  %6771 = vmatpush.msra.mxu0 %v6227
  %6772 = vmatpush.msra.mxu0 %v6219
  %6773 = vmatpush.msra.mxu0 %v6211
  %6774 = vmatpush.msra.mxu0 %v6203
  %6775 = vmatpush.msra.mxu0 %v6195
  %6776 = vmatpush.msra.mxu0 %v6187
  %6777 = vmatpush.msra.mxu0 %v6179
  %6778 = vmatmul.f32.gmra.mxu0 %v5780
  %v6779 = vpop.f32.mrf.mxu0
  %v6780 = vadd.f32 %v6760, %v6779
  %6781 = vdwg.mxu0
  %6782 = vmatpush.msra.mxu0 %v5916
  %6783 = vmatpush.msra.mxu0 %v5908
  %6784 = vmatpush.msra.mxu0 %v5900
  %6785 = vmatpush.msra.mxu0 %v5892
  %6786 = vmatpush.msra.mxu0 %v5884
  %6787 = vmatpush.msra.mxu0 %v5876
  %6788 = vmatpush.msra.mxu0 %v5868
  %6789 = vmatpush.msra.mxu0 %v5860
  %6790 = vmatpush.msra.mxu0 %v5852
  %6791 = vmatpush.msra.mxu0 %v5844
  %6792 = vmatpush.msra.mxu0 %v5836
  %6793 = vmatpush.msra.mxu0 %v5828
  %6794 = vmatpush.msra.mxu0 %v5820
  %6795 = vmatpush.msra.mxu0 %v5812
  %6796 = vmatpush.msra.mxu0 %v5804
  %6797 = vmatpush.msra.mxu0 %v5796
  %6798 = vmatmul.f32.gmra.mxu0 %v5777
  %v6799 = vpop.f32.mrf.mxu0
  %v6800 = vadd.f32 0.0, %v6799
  %6801 = vdwg.mxu0
  %6802 = vmatpush.msra.mxu0 %v6044
  %6803 = vmatpush.msra.mxu0 %v6036
  %6804 = vmatpush.msra.mxu0 %v6028
  %6805 = vmatpush.msra.mxu0 %v6020
  %6806 = vmatpush.msra.mxu0 %v6012
  %6807 = vmatpush.msra.mxu0 %v6004
  %6808 = vmatpush.msra.mxu0 %v5996
  %6809 = vmatpush.msra.mxu0 %v5988
  %6810 = vmatpush.msra.mxu0 %v5980
  %6811 = vmatpush.msra.mxu0 %v5972
  %6812 = vmatpush.msra.mxu0 %v5964
  %6813 = vmatpush.msra.mxu0 %v5956
  %6814 = vmatpush.msra.mxu0 %v5948
  %6815 = vmatpush.msra.mxu0 %v5940
  %6816 = vmatpush.msra.mxu0 %v5932
  %6817 = vmatpush.msra.mxu0 %v5924
  %6818 = vmatmul.f32.gmra.mxu0 %v5778
  %v6819 = vpop.f32.mrf.mxu0
  %v6820 = vadd.f32 %v6800, %v6819
  %6821 = vdwg.mxu0
  %6822 = vmatpush.msra.mxu0 %v6172
  %6823 = vmatpush.msra.mxu0 %v6164
  %6824 = vmatpush.msra.mxu0 %v6156
  %6825 = vmatpush.msra.mxu0 %v6148
  %6826 = vmatpush.msra.mxu0 %v6140
  %6827 = vmatpush.msra.mxu0 %v6132
  %6828 = vmatpush.msra.mxu0 %v6124
  %6829 = vmatpush.msra.mxu0 %v6116
  %6830 = vmatpush.msra.mxu0 %v6108
  %6831 = vmatpush.msra.mxu0 %v6100
  %6832 = vmatpush.msra.mxu0 %v6092
  %6833 = vmatpush.msra.mxu0 %v6084
  %6834 = vmatpush.msra.mxu0 %v6076
  %6835 = vmatpush.msra.mxu0 %v6068
  %6836 = vmatpush.msra.mxu0 %v6060
  %6837 = vmatpush.msra.mxu0 %v6052
  %6838 = vmatmul.f32.gmra.mxu0 %v5779
  %v6839 = vpop.f32.mrf.mxu0
  %v6840 = vadd.f32 %v6820, %v6839
  %6841 = vdwg.mxu0
  %6842 = vmatpush.msra.mxu0 %v6300
  %6843 = vmatpush.msra.mxu0 %v6292
  %6844 = vmatpush.msra.mxu0 %v6284
  %6845 = vmatpush.msra.mxu0 %v6276
  %6846 = vmatpush.msra.mxu0 %v6268
  %6847 = vmatpush.msra.mxu0 %v6260
  %6848 = vmatpush.msra.mxu0 %v6252
  %6849 = vmatpush.msra.mxu0 %v6244
  %6850 = vmatpush.msra.mxu0 %v6236
  %6851 = vmatpush.msra.mxu0 %v6228
  %6852 = vmatpush.msra.mxu0 %v6220
  %6853 = vmatpush.msra.mxu0 %v6212
  %6854 = vmatpush.msra.mxu0 %v6204
  %6855 = vmatpush.msra.mxu0 %v6196
  %6856 = vmatpush.msra.mxu0 %v6188
  %6857 = vmatpush.msra.mxu0 %v6180
  %6858 = vmatmul.f32.gmra.mxu0 %v5780
  %v6859 = vpop.f32.mrf.mxu0
  %v6860 = vadd.f32 %v6840, %v6859
  %6861 = vdwg.mxu0
  %6862 = vmatpush.msra.mxu0 %v5917
  %6863 = vmatpush.msra.mxu0 %v5909
  %6864 = vmatpush.msra.mxu0 %v5901
  %6865 = vmatpush.msra.mxu0 %v5893
  %6866 = vmatpush.msra.mxu0 %v5885
  %6867 = vmatpush.msra.mxu0 %v5877
  %6868 = vmatpush.msra.mxu0 %v5869
  %6869 = vmatpush.msra.mxu0 %v5861
  %6870 = vmatpush.msra.mxu0 %v5853
  %6871 = vmatpush.msra.mxu0 %v5845
  %6872 = vmatpush.msra.mxu0 %v5837
  %6873 = vmatpush.msra.mxu0 %v5829
  %6874 = vmatpush.msra.mxu0 %v5821
  %6875 = vmatpush.msra.mxu0 %v5813
  %6876 = vmatpush.msra.mxu0 %v5805
  %6877 = vmatpush.msra.mxu0 %v5797
  %6878 = vmatmul.f32.gmra.mxu0 %v5777
  %v6879 = vpop.f32.mrf.mxu0
  %v6880 = vadd.f32 0.0, %v6879
  %6881 = vdwg.mxu0
  %6882 = vmatpush.msra.mxu0 %v6045
  %6883 = vmatpush.msra.mxu0 %v6037
  %6884 = vmatpush.msra.mxu0 %v6029
  %6885 = vmatpush.msra.mxu0 %v6021
  %6886 = vmatpush.msra.mxu0 %v6013
  %6887 = vmatpush.msra.mxu0 %v6005
  %6888 = vmatpush.msra.mxu0 %v5997
  %6889 = vmatpush.msra.mxu0 %v5989
  %6890 = vmatpush.msra.mxu0 %v5981
  %6891 = vmatpush.msra.mxu0 %v5973
  %6892 = vmatpush.msra.mxu0 %v5965
  %6893 = vmatpush.msra.mxu0 %v5957
  %6894 = vmatpush.msra.mxu0 %v5949
  %6895 = vmatpush.msra.mxu0 %v5941
  %6896 = vmatpush.msra.mxu0 %v5933
  %6897 = vmatpush.msra.mxu0 %v5925
  %6898 = vmatmul.f32.gmra.mxu0 %v5778
  %v6899 = vpop.f32.mrf.mxu0
  %v6900 = vadd.f32 %v6880, %v6899
  %6901 = vdwg.mxu0
  %6902 = vmatpush.msra.mxu0 %v6173
  %6903 = vmatpush.msra.mxu0 %v6165
  %6904 = vmatpush.msra.mxu0 %v6157
  %6905 = vmatpush.msra.mxu0 %v6149
  %6906 = vmatpush.msra.mxu0 %v6141
  %6907 = vmatpush.msra.mxu0 %v6133
  %6908 = vmatpush.msra.mxu0 %v6125
  %6909 = vmatpush.msra.mxu0 %v6117
  %6910 = vmatpush.msra.mxu0 %v6109
  %6911 = vmatpush.msra.mxu0 %v6101
  %6912 = vmatpush.msra.mxu0 %v6093
  %6913 = vmatpush.msra.mxu0 %v6085
  %6914 = vmatpush.msra.mxu0 %v6077
  %6915 = vmatpush.msra.mxu0 %v6069
  %6916 = vmatpush.msra.mxu0 %v6061
  %6917 = vmatpush.msra.mxu0 %v6053
  %6918 = vmatmul.f32.gmra.mxu0 %v5779
  %v6919 = vpop.f32.mrf.mxu0
  %v6920 = vadd.f32 %v6900, %v6919
  %6921 = vdwg.mxu0
  %6922 = vmatpush.msra.mxu0 %v6301
  %6923 = vmatpush.msra.mxu0 %v6293
  %6924 = vmatpush.msra.mxu0 %v6285
  %6925 = vmatpush.msra.mxu0 %v6277
  %6926 = vmatpush.msra.mxu0 %v6269
  %6927 = vmatpush.msra.mxu0 %v6261
  %6928 = vmatpush.msra.mxu0 %v6253
  %6929 = vmatpush.msra.mxu0 %v6245
  %6930 = vmatpush.msra.mxu0 %v6237
  %6931 = vmatpush.msra.mxu0 %v6229
  %6932 = vmatpush.msra.mxu0 %v6221
  %6933 = vmatpush.msra.mxu0 %v6213
  %6934 = vmatpush.msra.mxu0 %v6205
  %6935 = vmatpush.msra.mxu0 %v6197
  %6936 = vmatpush.msra.mxu0 %v6189
  %6937 = vmatpush.msra.mxu0 %v6181
  %6938 = vmatmul.f32.gmra.mxu0 %v5780
  %v6939 = vpop.f32.mrf.mxu0
  %v6940 = vadd.f32 %v6920, %v6939
  %6941 = vdwg.mxu0
  %v6942 = vadd.f32 %v5782, %v6380
  %v6943 = vadd.f32 %v5783, %v6460
  %v6944 = vadd.f32 %v5784, %v6540
  %v6945 = vadd.f32 %v5785, %v6620
  %v6946 = vadd.f32 %v5786, %v6700
  %v6947 = vadd.f32 %v5787, %v6780
  %v6948 = vadd.f32 %v5788, %v6860
  %v6949 = vadd.f32 %v5789, %v6940
  %v6950 = vxor.u32 %v6942, 2147483648
  %v6951 = vxor.u32 %v6943, 2147483648
  %v6952 = vxor.u32 %v6944, 2147483648
  %v6953 = vxor.u32 %v6945, 2147483648
  %v6954 = vxor.u32 %v6946, 2147483648
  %v6955 = vxor.u32 %v6947, 2147483648
  %v6956 = vmul.f32 %v6950, 1.442695
  %v6957 = vpow.pop %v6956
  %v6958 = vmul.f32 %v6951, 1.442695
  %v6959 = vpow.pop %v6958
  %v6960 = vmul.f32 %v6952, 1.442695
  %v6961 = vpow.pop %v6960
  %v6962 = vmul.f32 %v6953, 1.442695
  %v6963 = vpow.pop %v6962
  %v6964 = vmul.f32 %v6954, 1.442695
  %v6965 = vpow.pop %v6964
  %v6966 = vmul.f32 %v6955, 1.442695
  %v6967 = vpow.pop %v6966
  %v6968 = vadd.f32 %v6957, 1.0
  %v6969 = vadd.f32 %v6959, 1.0
  %v6970 = vadd.f32 %v6961, 1.0
  %v6971 = vadd.f32 %v6963, 1.0
  %v6972 = vadd.f32 %v6965, 1.0
  %v6973 = vadd.f32 %v6967, 1.0
  %v6974 = vrcp.pop %v6968
  %v6975 = vmul.f32 %v6968, %v6974
  %v6976 = vsub.f32 1.0, %v6975
  %v6977 = vmul.f32 %v6974, %v6976
  %v6978 = vadd.f32 %v6974, %v6977
  %vm6979 = vweird.f32 %v6968
  %vm6980 = vweird.f32 %v6974
  %vm6981 = vmor %vm6979, %vm6980
  %v6982 = vsel %vm6981, %v6974, %v6978
  %v6983 = vand.u32 2147483647, %v6968
  %vm6984 = vcmp.eq.f32.partialorder %v6983, 8.507059e+37
  %v6985 = vand.u32 %v6968, 2147483648
  %v6986 = vor.u32 1.1754944e-38, %v6985
  %v6987 = vsel %vm6984, %v6986, %v6982
  %v6988 = vmul.f32 1.0, %v6987
  %v6989 = vrcp.pop %v6969
  %v6990 = vmul.f32 %v6969, %v6989
  %v6991 = vsub.f32 1.0, %v6990
  %v6992 = vmul.f32 %v6989, %v6991
  %v6993 = vadd.f32 %v6989, %v6992
  %vm6994 = vweird.f32 %v6969
  %vm6995 = vweird.f32 %v6989
  %vm6996 = vmor %vm6994, %vm6995
  %v6997 = vsel %vm6996, %v6989, %v6993
  %v6998 = vand.u32 2147483647, %v6969
  %vm6999 = vcmp.eq.f32.partialorder %v6998, 8.507059e+37
  %v7000 = vand.u32 %v6969, 2147483648
  %v7001 = vor.u32 1.1754944e-38, %v7000
  %v7002 = vsel %vm6999, %v7001, %v6997
  %v7003 = vmul.f32 1.0, %v7002
  %v7004 = vrcp.pop %v6970
  %v7005 = vmul.f32 %v6970, %v7004
  %v7006 = vsub.f32 1.0, %v7005
  %v7007 = vmul.f32 %v7004, %v7006
  %v7008 = vadd.f32 %v7004, %v7007
  %vm7009 = vweird.f32 %v6970
  %vm7010 = vweird.f32 %v7004
  %vm7011 = vmor %vm7009, %vm7010
  %v7012 = vsel %vm7011, %v7004, %v7008
  %v7013 = vand.u32 2147483647, %v6970
  %vm7014 = vcmp.eq.f32.partialorder %v7013, 8.507059e+37
  %v7015 = vand.u32 %v6970, 2147483648
  %v7016 = vor.u32 1.1754944e-38, %v7015
  %v7017 = vsel %vm7014, %v7016, %v7012
  %v7018 = vmul.f32 1.0, %v7017
  %v7019 = vrcp.pop %v6971
  %v7020 = vmul.f32 %v6971, %v7019
  %v7021 = vsub.f32 1.0, %v7020
  %v7022 = vmul.f32 %v7019, %v7021
  %v7023 = vadd.f32 %v7019, %v7022
  %vm7024 = vweird.f32 %v6971
  %vm7025 = vweird.f32 %v7019
  %vm7026 = vmor %vm7024, %vm7025
  %v7027 = vsel %vm7026, %v7019, %v7023
  %v7028 = vand.u32 2147483647, %v6971
  %vm7029 = vcmp.eq.f32.partialorder %v7028, 8.507059e+37
  %v7030 = vand.u32 %v6971, 2147483648
  %v7031 = vor.u32 1.1754944e-38, %v7030
  %v7032 = vsel %vm7029, %v7031, %v7027
  %v7033 = vmul.f32 1.0, %v7032
  %v7034 = vrcp.pop %v6972
  %v7035 = vmul.f32 %v6972, %v7034
  %v7036 = vsub.f32 1.0, %v7035
  %v7037 = vmul.f32 %v7034, %v7036
  %v7038 = vadd.f32 %v7034, %v7037
  %vm7039 = vweird.f32 %v6972
  %vm7040 = vweird.f32 %v7034
  %vm7041 = vmor %vm7039, %vm7040
  %v7042 = vsel %vm7041, %v7034, %v7038
  %v7043 = vand.u32 2147483647, %v6972
  %vm7044 = vcmp.eq.f32.partialorder %v7043, 8.507059e+37
  %v7045 = vand.u32 %v6972, 2147483648
  %v7046 = vor.u32 1.1754944e-38, %v7045
  %v7047 = vsel %vm7044, %v7046, %v7042
  %v7048 = vmul.f32 1.0, %v7047
  %v7049 = vrcp.pop %v6973
  %v7050 = vmul.f32 %v6973, %v7049
  %v7051 = vsub.f32 1.0, %v7050
  %v7052 = vmul.f32 %v7049, %v7051
  %v7053 = vadd.f32 %v7049, %v7052
  %vm7054 = vweird.f32 %v6973
  %vm7055 = vweird.f32 %v7049
  %vm7056 = vmor %vm7054, %vm7055
  %v7057 = vsel %vm7056, %v7049, %v7053
  %v7058 = vand.u32 2147483647, %v6973
  %vm7059 = vcmp.eq.f32.partialorder %v7058, 8.507059e+37
  %v7060 = vand.u32 %v6973, 2147483648
  %v7061 = vor.u32 1.1754944e-38, %v7060
  %v7062 = vsel %vm7059, %v7061, %v7057
  %v7063 = vmul.f32 1.0, %v7062
  %v7064 = vtanh.pop %v6948
  %v7065 = vtanh.pop %v6949
  %v7066 = vmul.f32 %v7018, %v5765
  %v7067 = vmul.f32 %v7033, %v5766
  %v7068 = vmul.f32 %v6988, %v7064
  %v7069 = vmul.f32 %v7003, %v7065
  %v7070 = vadd.f32 %v7066, %v7068
  %v7071 = vadd.f32 %v7067, %v7069
  %v7072 = vtanh.pop %v7070
  %v7073 = vtanh.pop %v7071
  %v7074 = vmul.f32 %v7048, %v7072
  %v7075 = vmul.f32 %v7063, %v7073
  %s7076 = scalar_lea.vmem [#allocation3], 64
  %7077 = vst [vmem:[%s7076] sm:$0xff] %v7074
  %7078 = vst [vmem:[%s7076 + $0x8] sm:$0xff] %v7075
  %s7079 = scalar_lea.vmem [#allocation4], 48
  %7080 = vst [vmem:[%s7079] sm:$0xff] %v7074
  %7081 = vst [vmem:[%s7079 + $0x8] sm:$0xff] %v7075
  %v7082 = vmul.f32 %v7074, %v555
  %v7083 = vmul.f32 %v7075, %v555
  %v7084 = vmul.f32 %v7074, %v560
  %v7085 = vmul.f32 %v7075, %v560
  %s7086 = scalar_lea.vmem [#allocation2], 320
  %v7087 = vld [vmem:[%s7086] sm:$0xff]
  %v7088 = vld [vmem:[%s7086 + $0x8] sm:$0xff]
  %v7089 = vld [vmem:[%s7086 + $0x10] sm:$0xff]
  %v7090 = vld [vmem:[%s7086 + $0x18] sm:$0xff]
  %v7091 = vld [vmem:[%s7086 + $0x20] sm:$0xff]
  %v7092 = vld [vmem:[%s7086 + $0x28] sm:$0xff]
  %v7093 = vld [vmem:[%s7086 + $0x30] sm:$0xff]
  %v7094 = vld [vmem:[%s7086 + $0x38] sm:$0xff]
  %v7095 = vld [vmem:[%s2] sm:$0xff]
  %v7096 = vld [vmem:[%s2 + $0x8] sm:$0xff]
  %v7097 = vld [vmem:[%s2 + $0x10] sm:$0xff]
  %v7098 = vld [vmem:[%s2 + $0x18] sm:$0xff]
  %v7099 = vld [vmem:[%s2 + $0x20] sm:$0xff]
  %v7100 = vld [vmem:[%s2 + $0x28] sm:$0xff]
  %v7101 = vld [vmem:[%s2 + $0x30] sm:$0xff]
  %v7102 = vld [vmem:[%s2 + $0x38] sm:$0xff]
  %v7103 = vld [vmem:[%s2 + $0x40] sm:$0xff]
  %v7104 = vld [vmem:[%s2 + $0x48] sm:$0xff]
  %v7105 = vld [vmem:[%s2 + $0x50] sm:$0xff]
  %v7106 = vld [vmem:[%s2 + $0x58] sm:$0xff]
  %v7107 = vld [vmem:[%s2 + $0x60] sm:$0xff]
  %v7108 = vld [vmem:[%s2 + $0x68] sm:$0xff]
  %v7109 = vld [vmem:[%s2 + $0x70] sm:$0xff]
  %v7110 = vld [vmem:[%s2 + $0x78] sm:$0xff]
  %v7111 = vld [vmem:[%s2 + $0x80] sm:$0xff]
  %v7112 = vld [vmem:[%s2 + $0x88] sm:$0xff]
  %v7113 = vld [vmem:[%s2 + $0x90] sm:$0xff]
  %v7114 = vld [vmem:[%s2 + $0x98] sm:$0xff]
  %v7115 = vld [vmem:[%s2 + $0xa0] sm:$0xff]
  %v7116 = vld [vmem:[%s2 + $0xa8] sm:$0xff]
  %v7117 = vld [vmem:[%s2 + $0xb0] sm:$0xff]
  %v7118 = vld [vmem:[%s2 + $0xb8] sm:$0xff]
  %v7119 = vld [vmem:[%s2 + $0xc0] sm:$0xff]
  %v7120 = vld [vmem:[%s2 + $0xc8] sm:$0xff]
  %v7121 = vld [vmem:[%s2 + $0xd0] sm:$0xff]
  %v7122 = vld [vmem:[%s2 + $0xd8] sm:$0xff]
  %v7123 = vld [vmem:[%s2 + $0xe0] sm:$0xff]
  %v7124 = vld [vmem:[%s2 + $0xe8] sm:$0xff]
  %v7125 = vld [vmem:[%s2 + $0xf0] sm:$0xff]
  %v7126 = vld [vmem:[%s2 + $0xf8] sm:$0xff]
  %v7127 = vld [vmem:[%s2 + $0x100] sm:$0xff]
  %v7128 = vld [vmem:[%s2 + $0x108] sm:$0xff]
  %v7129 = vld [vmem:[%s2 + $0x110] sm:$0xff]
  %v7130 = vld [vmem:[%s2 + $0x118] sm:$0xff]
  %v7131 = vld [vmem:[%s2 + $0x120] sm:$0xff]
  %v7132 = vld [vmem:[%s2 + $0x128] sm:$0xff]
  %v7133 = vld [vmem:[%s2 + $0x130] sm:$0xff]
  %v7134 = vld [vmem:[%s2 + $0x138] sm:$0xff]
  %v7135 = vld [vmem:[%s2 + $0x140] sm:$0xff]
  %v7136 = vld [vmem:[%s2 + $0x148] sm:$0xff]
  %v7137 = vld [vmem:[%s2 + $0x150] sm:$0xff]
  %v7138 = vld [vmem:[%s2 + $0x158] sm:$0xff]
  %v7139 = vld [vmem:[%s2 + $0x160] sm:$0xff]
  %v7140 = vld [vmem:[%s2 + $0x168] sm:$0xff]
  %v7141 = vld [vmem:[%s2 + $0x170] sm:$0xff]
  %v7142 = vld [vmem:[%s2 + $0x178] sm:$0xff]
  %v7143 = vld [vmem:[%s2 + $0x180] sm:$0xff]
  %v7144 = vld [vmem:[%s2 + $0x188] sm:$0xff]
  %v7145 = vld [vmem:[%s2 + $0x190] sm:$0xff]
  %v7146 = vld [vmem:[%s2 + $0x198] sm:$0xff]
  %v7147 = vld [vmem:[%s2 + $0x1a0] sm:$0xff]
  %v7148 = vld [vmem:[%s2 + $0x1a8] sm:$0xff]
  %v7149 = vld [vmem:[%s2 + $0x1b0] sm:$0xff]
  %v7150 = vld [vmem:[%s2 + $0x1b8] sm:$0xff]
  %v7151 = vld [vmem:[%s2 + $0x1c0] sm:$0xff]
  %v7152 = vld [vmem:[%s2 + $0x1c8] sm:$0xff]
  %v7153 = vld [vmem:[%s2 + $0x1d0] sm:$0xff]
  %v7154 = vld [vmem:[%s2 + $0x1d8] sm:$0xff]
  %v7155 = vld [vmem:[%s2 + $0x1e0] sm:$0xff]
  %v7156 = vld [vmem:[%s2 + $0x1e8] sm:$0xff]
  %v7157 = vld [vmem:[%s2 + $0x1f0] sm:$0xff]
  %v7158 = vld [vmem:[%s2 + $0x1f8] sm:$0xff]
  %v7159 = vld [vmem:[%s2 + $0x200] sm:$0xff]
  %v7160 = vld [vmem:[%s2 + $0x208] sm:$0xff]
  %v7161 = vld [vmem:[%s2 + $0x210] sm:$0xff]
  %v7162 = vld [vmem:[%s2 + $0x218] sm:$0xff]
  %v7163 = vld [vmem:[%s2 + $0x220] sm:$0xff]
  %v7164 = vld [vmem:[%s2 + $0x228] sm:$0xff]
  %v7165 = vld [vmem:[%s2 + $0x230] sm:$0xff]
  %v7166 = vld [vmem:[%s2 + $0x238] sm:$0xff]
  %v7167 = vld [vmem:[%s2 + $0x240] sm:$0xff]
  %v7168 = vld [vmem:[%s2 + $0x248] sm:$0xff]
  %v7169 = vld [vmem:[%s2 + $0x250] sm:$0xff]
  %v7170 = vld [vmem:[%s2 + $0x258] sm:$0xff]
  %v7171 = vld [vmem:[%s2 + $0x260] sm:$0xff]
  %v7172 = vld [vmem:[%s2 + $0x268] sm:$0xff]
  %v7173 = vld [vmem:[%s2 + $0x270] sm:$0xff]
  %v7174 = vld [vmem:[%s2 + $0x278] sm:$0xff]
  %v7175 = vld [vmem:[%s2 + $0x280] sm:$0xff]
  %v7176 = vld [vmem:[%s2 + $0x288] sm:$0xff]
  %v7177 = vld [vmem:[%s2 + $0x290] sm:$0xff]
  %v7178 = vld [vmem:[%s2 + $0x298] sm:$0xff]
  %v7179 = vld [vmem:[%s2 + $0x2a0] sm:$0xff]
  %v7180 = vld [vmem:[%s2 + $0x2a8] sm:$0xff]
  %v7181 = vld [vmem:[%s2 + $0x2b0] sm:$0xff]
  %v7182 = vld [vmem:[%s2 + $0x2b8] sm:$0xff]
  %v7183 = vld [vmem:[%s2 + $0x2c0] sm:$0xff]
  %v7184 = vld [vmem:[%s2 + $0x2c8] sm:$0xff]
  %v7185 = vld [vmem:[%s2 + $0x2d0] sm:$0xff]
  %v7186 = vld [vmem:[%s2 + $0x2d8] sm:$0xff]
  %v7187 = vld [vmem:[%s2 + $0x2e0] sm:$0xff]
  %v7188 = vld [vmem:[%s2 + $0x2e8] sm:$0xff]
  %v7189 = vld [vmem:[%s2 + $0x2f0] sm:$0xff]
  %v7190 = vld [vmem:[%s2 + $0x2f8] sm:$0xff]
  %v7191 = vld [vmem:[%s2 + $0x300] sm:$0xff]
  %v7192 = vld [vmem:[%s2 + $0x308] sm:$0xff]
  %v7193 = vld [vmem:[%s2 + $0x310] sm:$0xff]
  %v7194 = vld [vmem:[%s2 + $0x318] sm:$0xff]
  %v7195 = vld [vmem:[%s2 + $0x320] sm:$0xff]
  %v7196 = vld [vmem:[%s2 + $0x328] sm:$0xff]
  %v7197 = vld [vmem:[%s2 + $0x330] sm:$0xff]
  %v7198 = vld [vmem:[%s2 + $0x338] sm:$0xff]
  %v7199 = vld [vmem:[%s2 + $0x340] sm:$0xff]
  %v7200 = vld [vmem:[%s2 + $0x348] sm:$0xff]
  %v7201 = vld [vmem:[%s2 + $0x350] sm:$0xff]
  %v7202 = vld [vmem:[%s2 + $0x358] sm:$0xff]
  %v7203 = vld [vmem:[%s2 + $0x360] sm:$0xff]
  %v7204 = vld [vmem:[%s2 + $0x368] sm:$0xff]
  %v7205 = vld [vmem:[%s2 + $0x370] sm:$0xff]
  %v7206 = vld [vmem:[%s2 + $0x378] sm:$0xff]
  %v7207 = vld [vmem:[%s2 + $0x380] sm:$0xff]
  %v7208 = vld [vmem:[%s2 + $0x388] sm:$0xff]
  %v7209 = vld [vmem:[%s2 + $0x390] sm:$0xff]
  %v7210 = vld [vmem:[%s2 + $0x398] sm:$0xff]
  %v7211 = vld [vmem:[%s2 + $0x3a0] sm:$0xff]
  %v7212 = vld [vmem:[%s2 + $0x3a8] sm:$0xff]
  %v7213 = vld [vmem:[%s2 + $0x3b0] sm:$0xff]
  %v7214 = vld [vmem:[%s2 + $0x3b8] sm:$0xff]
  %v7215 = vld [vmem:[%s2 + $0x3c0] sm:$0xff]
  %v7216 = vld [vmem:[%s2 + $0x3c8] sm:$0xff]
  %v7217 = vld [vmem:[%s2 + $0x3d0] sm:$0xff]
  %v7218 = vld [vmem:[%s2 + $0x3d8] sm:$0xff]
  %v7219 = vld [vmem:[%s2 + $0x3e0] sm:$0xff]
  %v7220 = vld [vmem:[%s2 + $0x3e8] sm:$0xff]
  %v7221 = vld [vmem:[%s2 + $0x3f0] sm:$0xff]
  %v7222 = vld [vmem:[%s2 + $0x3f8] sm:$0xff]
  %v7223 = vld [vmem:[%s2 + $0x400] sm:$0xff]
  %v7224 = vld [vmem:[%s2 + $0x408] sm:$0xff]
  %v7225 = vld [vmem:[%s2 + $0x410] sm:$0xff]
  %v7226 = vld [vmem:[%s2 + $0x418] sm:$0xff]
  %v7227 = vld [vmem:[%s2 + $0x420] sm:$0xff]
  %v7228 = vld [vmem:[%s2 + $0x428] sm:$0xff]
  %v7229 = vld [vmem:[%s2 + $0x430] sm:$0xff]
  %v7230 = vld [vmem:[%s2 + $0x438] sm:$0xff]
  %v7231 = vld [vmem:[%s2 + $0x440] sm:$0xff]
  %v7232 = vld [vmem:[%s2 + $0x448] sm:$0xff]
  %v7233 = vld [vmem:[%s2 + $0x450] sm:$0xff]
  %v7234 = vld [vmem:[%s2 + $0x458] sm:$0xff]
  %v7235 = vld [vmem:[%s2 + $0x460] sm:$0xff]
  %v7236 = vld [vmem:[%s2 + $0x468] sm:$0xff]
  %v7237 = vld [vmem:[%s2 + $0x470] sm:$0xff]
  %v7238 = vld [vmem:[%s2 + $0x478] sm:$0xff]
  %v7239 = vld [vmem:[%s2 + $0x480] sm:$0xff]
  %v7240 = vld [vmem:[%s2 + $0x488] sm:$0xff]
  %v7241 = vld [vmem:[%s2 + $0x490] sm:$0xff]
  %v7242 = vld [vmem:[%s2 + $0x498] sm:$0xff]
  %v7243 = vld [vmem:[%s2 + $0x4a0] sm:$0xff]
  %v7244 = vld [vmem:[%s2 + $0x4a8] sm:$0xff]
  %v7245 = vld [vmem:[%s2 + $0x4b0] sm:$0xff]
  %v7246 = vld [vmem:[%s2 + $0x4b8] sm:$0xff]
  %v7247 = vld [vmem:[%s2 + $0x4c0] sm:$0xff]
  %v7248 = vld [vmem:[%s2 + $0x4c8] sm:$0xff]
  %v7249 = vld [vmem:[%s2 + $0x4d0] sm:$0xff]
  %v7250 = vld [vmem:[%s2 + $0x4d8] sm:$0xff]
  %v7251 = vld [vmem:[%s2 + $0x4e0] sm:$0xff]
  %v7252 = vld [vmem:[%s2 + $0x4e8] sm:$0xff]
  %v7253 = vld [vmem:[%s2 + $0x4f0] sm:$0xff]
  %v7254 = vld [vmem:[%s2 + $0x4f8] sm:$0xff]
  %v7255 = vld [vmem:[%s2 + $0x500] sm:$0xff]
  %v7256 = vld [vmem:[%s2 + $0x508] sm:$0xff]
  %v7257 = vld [vmem:[%s2 + $0x510] sm:$0xff]
  %v7258 = vld [vmem:[%s2 + $0x518] sm:$0xff]
  %v7259 = vld [vmem:[%s2 + $0x520] sm:$0xff]
  %v7260 = vld [vmem:[%s2 + $0x528] sm:$0xff]
  %v7261 = vld [vmem:[%s2 + $0x530] sm:$0xff]
  %v7262 = vld [vmem:[%s2 + $0x538] sm:$0xff]
  %v7263 = vld [vmem:[%s2 + $0x540] sm:$0xff]
  %v7264 = vld [vmem:[%s2 + $0x548] sm:$0xff]
  %v7265 = vld [vmem:[%s2 + $0x550] sm:$0xff]
  %v7266 = vld [vmem:[%s2 + $0x558] sm:$0xff]
  %v7267 = vld [vmem:[%s2 + $0x560] sm:$0xff]
  %v7268 = vld [vmem:[%s2 + $0x568] sm:$0xff]
  %v7269 = vld [vmem:[%s2 + $0x570] sm:$0xff]
  %v7270 = vld [vmem:[%s2 + $0x578] sm:$0xff]
  %v7271 = vld [vmem:[%s2 + $0x580] sm:$0xff]
  %v7272 = vld [vmem:[%s2 + $0x588] sm:$0xff]
  %v7273 = vld [vmem:[%s2 + $0x590] sm:$0xff]
  %v7274 = vld [vmem:[%s2 + $0x598] sm:$0xff]
  %v7275 = vld [vmem:[%s2 + $0x5a0] sm:$0xff]
  %v7276 = vld [vmem:[%s2 + $0x5a8] sm:$0xff]
  %v7277 = vld [vmem:[%s2 + $0x5b0] sm:$0xff]
  %v7278 = vld [vmem:[%s2 + $0x5b8] sm:$0xff]
  %v7279 = vld [vmem:[%s2 + $0x5c0] sm:$0xff]
  %v7280 = vld [vmem:[%s2 + $0x5c8] sm:$0xff]
  %v7281 = vld [vmem:[%s2 + $0x5d0] sm:$0xff]
  %v7282 = vld [vmem:[%s2 + $0x5d8] sm:$0xff]
  %v7283 = vld [vmem:[%s2 + $0x5e0] sm:$0xff]
  %v7284 = vld [vmem:[%s2 + $0x5e8] sm:$0xff]
  %v7285 = vld [vmem:[%s2 + $0x5f0] sm:$0xff]
  %v7286 = vld [vmem:[%s2 + $0x5f8] sm:$0xff]
  %v7287 = vld [vmem:[%s2 + $0x600] sm:$0xff]
  %v7288 = vld [vmem:[%s2 + $0x608] sm:$0xff]
  %v7289 = vld [vmem:[%s2 + $0x610] sm:$0xff]
  %v7290 = vld [vmem:[%s2 + $0x618] sm:$0xff]
  %v7291 = vld [vmem:[%s2 + $0x620] sm:$0xff]
  %v7292 = vld [vmem:[%s2 + $0x628] sm:$0xff]
  %v7293 = vld [vmem:[%s2 + $0x630] sm:$0xff]
  %v7294 = vld [vmem:[%s2 + $0x638] sm:$0xff]
  %v7295 = vld [vmem:[%s2 + $0x640] sm:$0xff]
  %v7296 = vld [vmem:[%s2 + $0x648] sm:$0xff]
  %v7297 = vld [vmem:[%s2 + $0x650] sm:$0xff]
  %v7298 = vld [vmem:[%s2 + $0x658] sm:$0xff]
  %v7299 = vld [vmem:[%s2 + $0x660] sm:$0xff]
  %v7300 = vld [vmem:[%s2 + $0x668] sm:$0xff]
  %v7301 = vld [vmem:[%s2 + $0x670] sm:$0xff]
  %v7302 = vld [vmem:[%s2 + $0x678] sm:$0xff]
  %v7303 = vld [vmem:[%s2 + $0x680] sm:$0xff]
  %v7304 = vld [vmem:[%s2 + $0x688] sm:$0xff]
  %v7305 = vld [vmem:[%s2 + $0x690] sm:$0xff]
  %v7306 = vld [vmem:[%s2 + $0x698] sm:$0xff]
  %v7307 = vld [vmem:[%s2 + $0x6a0] sm:$0xff]
  %v7308 = vld [vmem:[%s2 + $0x6a8] sm:$0xff]
  %v7309 = vld [vmem:[%s2 + $0x6b0] sm:$0xff]
  %v7310 = vld [vmem:[%s2 + $0x6b8] sm:$0xff]
  %v7311 = vld [vmem:[%s2 + $0x6c0] sm:$0xff]
  %v7312 = vld [vmem:[%s2 + $0x6c8] sm:$0xff]
  %v7313 = vld [vmem:[%s2 + $0x6d0] sm:$0xff]
  %v7314 = vld [vmem:[%s2 + $0x6d8] sm:$0xff]
  %v7315 = vld [vmem:[%s2 + $0x6e0] sm:$0xff]
  %v7316 = vld [vmem:[%s2 + $0x6e8] sm:$0xff]
  %v7317 = vld [vmem:[%s2 + $0x6f0] sm:$0xff]
  %v7318 = vld [vmem:[%s2 + $0x6f8] sm:$0xff]
  %v7319 = vld [vmem:[%s2 + $0x700] sm:$0xff]
  %v7320 = vld [vmem:[%s2 + $0x708] sm:$0xff]
  %v7321 = vld [vmem:[%s2 + $0x710] sm:$0xff]
  %v7322 = vld [vmem:[%s2 + $0x718] sm:$0xff]
  %v7323 = vld [vmem:[%s2 + $0x720] sm:$0xff]
  %v7324 = vld [vmem:[%s2 + $0x728] sm:$0xff]
  %v7325 = vld [vmem:[%s2 + $0x730] sm:$0xff]
  %v7326 = vld [vmem:[%s2 + $0x738] sm:$0xff]
  %v7327 = vld [vmem:[%s2 + $0x740] sm:$0xff]
  %v7328 = vld [vmem:[%s2 + $0x748] sm:$0xff]
  %v7329 = vld [vmem:[%s2 + $0x750] sm:$0xff]
  %v7330 = vld [vmem:[%s2 + $0x758] sm:$0xff]
  %v7331 = vld [vmem:[%s2 + $0x760] sm:$0xff]
  %v7332 = vld [vmem:[%s2 + $0x768] sm:$0xff]
  %v7333 = vld [vmem:[%s2 + $0x770] sm:$0xff]
  %v7334 = vld [vmem:[%s2 + $0x778] sm:$0xff]
  %v7335 = vld [vmem:[%s2 + $0x780] sm:$0xff]
  %v7336 = vld [vmem:[%s2 + $0x788] sm:$0xff]
  %v7337 = vld [vmem:[%s2 + $0x790] sm:$0xff]
  %v7338 = vld [vmem:[%s2 + $0x798] sm:$0xff]
  %v7339 = vld [vmem:[%s2 + $0x7a0] sm:$0xff]
  %v7340 = vld [vmem:[%s2 + $0x7a8] sm:$0xff]
  %v7341 = vld [vmem:[%s2 + $0x7b0] sm:$0xff]
  %v7342 = vld [vmem:[%s2 + $0x7b8] sm:$0xff]
  %v7343 = vld [vmem:[%s2 + $0x7c0] sm:$0xff]
  %v7344 = vld [vmem:[%s2 + $0x7c8] sm:$0xff]
  %v7345 = vld [vmem:[%s2 + $0x7d0] sm:$0xff]
  %v7346 = vld [vmem:[%s2 + $0x7d8] sm:$0xff]
  %v7347 = vld [vmem:[%s2 + $0x7e0] sm:$0xff]
  %v7348 = vld [vmem:[%s2 + $0x7e8] sm:$0xff]
  %v7349 = vld [vmem:[%s2 + $0x7f0] sm:$0xff]
  %v7350 = vld [vmem:[%s2 + $0x7f8] sm:$0xff]
  %v7351 = vld [vmem:[%s2 + $0x800] sm:$0xff]
  %v7352 = vld [vmem:[%s2 + $0x808] sm:$0xff]
  %v7353 = vld [vmem:[%s2 + $0x810] sm:$0xff]
  %v7354 = vld [vmem:[%s2 + $0x818] sm:$0xff]
  %v7355 = vld [vmem:[%s2 + $0x820] sm:$0xff]
  %v7356 = vld [vmem:[%s2 + $0x828] sm:$0xff]
  %v7357 = vld [vmem:[%s2 + $0x830] sm:$0xff]
  %v7358 = vld [vmem:[%s2 + $0x838] sm:$0xff]
  %v7359 = vld [vmem:[%s2 + $0x840] sm:$0xff]
  %v7360 = vld [vmem:[%s2 + $0x848] sm:$0xff]
  %v7361 = vld [vmem:[%s2 + $0x850] sm:$0xff]
  %v7362 = vld [vmem:[%s2 + $0x858] sm:$0xff]
  %v7363 = vld [vmem:[%s2 + $0x860] sm:$0xff]
  %v7364 = vld [vmem:[%s2 + $0x868] sm:$0xff]
  %v7365 = vld [vmem:[%s2 + $0x870] sm:$0xff]
  %v7366 = vld [vmem:[%s2 + $0x878] sm:$0xff]
  %v7367 = vld [vmem:[%s2 + $0x880] sm:$0xff]
  %v7368 = vld [vmem:[%s2 + $0x888] sm:$0xff]
  %v7369 = vld [vmem:[%s2 + $0x890] sm:$0xff]
  %v7370 = vld [vmem:[%s2 + $0x898] sm:$0xff]
  %v7371 = vld [vmem:[%s2 + $0x8a0] sm:$0xff]
  %v7372 = vld [vmem:[%s2 + $0x8a8] sm:$0xff]
  %v7373 = vld [vmem:[%s2 + $0x8b0] sm:$0xff]
  %v7374 = vld [vmem:[%s2 + $0x8b8] sm:$0xff]
  %v7375 = vld [vmem:[%s2 + $0x8c0] sm:$0xff]
  %v7376 = vld [vmem:[%s2 + $0x8c8] sm:$0xff]
  %v7377 = vld [vmem:[%s2 + $0x8d0] sm:$0xff]
  %v7378 = vld [vmem:[%s2 + $0x8d8] sm:$0xff]
  %v7379 = vld [vmem:[%s2 + $0x8e0] sm:$0xff]
  %v7380 = vld [vmem:[%s2 + $0x8e8] sm:$0xff]
  %v7381 = vld [vmem:[%s2 + $0x8f0] sm:$0xff]
  %v7382 = vld [vmem:[%s2 + $0x8f8] sm:$0xff]
  %v7383 = vld [vmem:[%s2 + $0x900] sm:$0xff]
  %v7384 = vld [vmem:[%s2 + $0x908] sm:$0xff]
  %v7385 = vld [vmem:[%s2 + $0x910] sm:$0xff]
  %v7386 = vld [vmem:[%s2 + $0x918] sm:$0xff]
  %v7387 = vld [vmem:[%s2 + $0x920] sm:$0xff]
  %v7388 = vld [vmem:[%s2 + $0x928] sm:$0xff]
  %v7389 = vld [vmem:[%s2 + $0x930] sm:$0xff]
  %v7390 = vld [vmem:[%s2 + $0x938] sm:$0xff]
  %v7391 = vld [vmem:[%s2 + $0x940] sm:$0xff]
  %v7392 = vld [vmem:[%s2 + $0x948] sm:$0xff]
  %v7393 = vld [vmem:[%s2 + $0x950] sm:$0xff]
  %v7394 = vld [vmem:[%s2 + $0x958] sm:$0xff]
  %v7395 = vld [vmem:[%s2 + $0x960] sm:$0xff]
  %v7396 = vld [vmem:[%s2 + $0x968] sm:$0xff]
  %v7397 = vld [vmem:[%s2 + $0x970] sm:$0xff]
  %v7398 = vld [vmem:[%s2 + $0x978] sm:$0xff]
  %v7399 = vld [vmem:[%s2 + $0x980] sm:$0xff]
  %v7400 = vld [vmem:[%s2 + $0x988] sm:$0xff]
  %v7401 = vld [vmem:[%s2 + $0x990] sm:$0xff]
  %v7402 = vld [vmem:[%s2 + $0x998] sm:$0xff]
  %v7403 = vld [vmem:[%s2 + $0x9a0] sm:$0xff]
  %v7404 = vld [vmem:[%s2 + $0x9a8] sm:$0xff]
  %v7405 = vld [vmem:[%s2 + $0x9b0] sm:$0xff]
  %v7406 = vld [vmem:[%s2 + $0x9b8] sm:$0xff]
  %v7407 = vld [vmem:[%s2 + $0x9c0] sm:$0xff]
  %v7408 = vld [vmem:[%s2 + $0x9c8] sm:$0xff]
  %v7409 = vld [vmem:[%s2 + $0x9d0] sm:$0xff]
  %v7410 = vld [vmem:[%s2 + $0x9d8] sm:$0xff]
  %v7411 = vld [vmem:[%s2 + $0x9e0] sm:$0xff]
  %v7412 = vld [vmem:[%s2 + $0x9e8] sm:$0xff]
  %v7413 = vld [vmem:[%s2 + $0x9f0] sm:$0xff]
  %v7414 = vld [vmem:[%s2 + $0x9f8] sm:$0xff]
  %v7415 = vld [vmem:[%s2 + $0xa00] sm:$0xff]
  %v7416 = vld [vmem:[%s2 + $0xa08] sm:$0xff]
  %v7417 = vld [vmem:[%s2 + $0xa10] sm:$0xff]
  %v7418 = vld [vmem:[%s2 + $0xa18] sm:$0xff]
  %v7419 = vld [vmem:[%s2 + $0xa20] sm:$0xff]
  %v7420 = vld [vmem:[%s2 + $0xa28] sm:$0xff]
  %v7421 = vld [vmem:[%s2 + $0xa30] sm:$0xff]
  %v7422 = vld [vmem:[%s2 + $0xa38] sm:$0xff]
  %v7423 = vld [vmem:[%s2 + $0xa40] sm:$0xff]
  %v7424 = vld [vmem:[%s2 + $0xa48] sm:$0xff]
  %v7425 = vld [vmem:[%s2 + $0xa50] sm:$0xff]
  %v7426 = vld [vmem:[%s2 + $0xa58] sm:$0xff]
  %v7427 = vld [vmem:[%s2 + $0xa60] sm:$0xff]
  %v7428 = vld [vmem:[%s2 + $0xa68] sm:$0xff]
  %v7429 = vld [vmem:[%s2 + $0xa70] sm:$0xff]
  %v7430 = vld [vmem:[%s2 + $0xa78] sm:$0xff]
  %v7431 = vld [vmem:[%s2 + $0xa80] sm:$0xff]
  %v7432 = vld [vmem:[%s2 + $0xa88] sm:$0xff]
  %v7433 = vld [vmem:[%s2 + $0xa90] sm:$0xff]
  %v7434 = vld [vmem:[%s2 + $0xa98] sm:$0xff]
  %v7435 = vld [vmem:[%s2 + $0xaa0] sm:$0xff]
  %v7436 = vld [vmem:[%s2 + $0xaa8] sm:$0xff]
  %v7437 = vld [vmem:[%s2 + $0xab0] sm:$0xff]
  %v7438 = vld [vmem:[%s2 + $0xab8] sm:$0xff]
  %v7439 = vld [vmem:[%s2 + $0xac0] sm:$0xff]
  %v7440 = vld [vmem:[%s2 + $0xac8] sm:$0xff]
  %v7441 = vld [vmem:[%s2 + $0xad0] sm:$0xff]
  %v7442 = vld [vmem:[%s2 + $0xad8] sm:$0xff]
  %v7443 = vld [vmem:[%s2 + $0xae0] sm:$0xff]
  %v7444 = vld [vmem:[%s2 + $0xae8] sm:$0xff]
  %v7445 = vld [vmem:[%s2 + $0xaf0] sm:$0xff]
  %v7446 = vld [vmem:[%s2 + $0xaf8] sm:$0xff]
  %v7447 = vld [vmem:[%s2 + $0xb00] sm:$0xff]
  %v7448 = vld [vmem:[%s2 + $0xb08] sm:$0xff]
  %v7449 = vld [vmem:[%s2 + $0xb10] sm:$0xff]
  %v7450 = vld [vmem:[%s2 + $0xb18] sm:$0xff]
  %v7451 = vld [vmem:[%s2 + $0xb20] sm:$0xff]
  %v7452 = vld [vmem:[%s2 + $0xb28] sm:$0xff]
  %v7453 = vld [vmem:[%s2 + $0xb30] sm:$0xff]
  %v7454 = vld [vmem:[%s2 + $0xb38] sm:$0xff]
  %v7455 = vld [vmem:[%s2 + $0xb40] sm:$0xff]
  %v7456 = vld [vmem:[%s2 + $0xb48] sm:$0xff]
  %v7457 = vld [vmem:[%s2 + $0xb50] sm:$0xff]
  %v7458 = vld [vmem:[%s2 + $0xb58] sm:$0xff]
  %v7459 = vld [vmem:[%s2 + $0xb60] sm:$0xff]
  %v7460 = vld [vmem:[%s2 + $0xb68] sm:$0xff]
  %v7461 = vld [vmem:[%s2 + $0xb70] sm:$0xff]
  %v7462 = vld [vmem:[%s2 + $0xb78] sm:$0xff]
  %v7463 = vld [vmem:[%s2 + $0xb80] sm:$0xff]
  %v7464 = vld [vmem:[%s2 + $0xb88] sm:$0xff]
  %v7465 = vld [vmem:[%s2 + $0xb90] sm:$0xff]
  %v7466 = vld [vmem:[%s2 + $0xb98] sm:$0xff]
  %v7467 = vld [vmem:[%s2 + $0xba0] sm:$0xff]
  %v7468 = vld [vmem:[%s2 + $0xba8] sm:$0xff]
  %v7469 = vld [vmem:[%s2 + $0xbb0] sm:$0xff]
  %v7470 = vld [vmem:[%s2 + $0xbb8] sm:$0xff]
  %v7471 = vld [vmem:[%s2 + $0xbc0] sm:$0xff]
  %v7472 = vld [vmem:[%s2 + $0xbc8] sm:$0xff]
  %v7473 = vld [vmem:[%s2 + $0xbd0] sm:$0xff]
  %v7474 = vld [vmem:[%s2 + $0xbd8] sm:$0xff]
  %v7475 = vld [vmem:[%s2 + $0xbe0] sm:$0xff]
  %v7476 = vld [vmem:[%s2 + $0xbe8] sm:$0xff]
  %v7477 = vld [vmem:[%s2 + $0xbf0] sm:$0xff]
  %v7478 = vld [vmem:[%s2 + $0xbf8] sm:$0xff]
  %v7479 = vld [vmem:[%s2 + $0xc00] sm:$0xff]
  %v7480 = vld [vmem:[%s2 + $0xc08] sm:$0xff]
  %v7481 = vld [vmem:[%s2 + $0xc10] sm:$0xff]
  %v7482 = vld [vmem:[%s2 + $0xc18] sm:$0xff]
  %v7483 = vld [vmem:[%s2 + $0xc20] sm:$0xff]
  %v7484 = vld [vmem:[%s2 + $0xc28] sm:$0xff]
  %v7485 = vld [vmem:[%s2 + $0xc30] sm:$0xff]
  %v7486 = vld [vmem:[%s2 + $0xc38] sm:$0xff]
  %v7487 = vld [vmem:[%s2 + $0xc40] sm:$0xff]
  %v7488 = vld [vmem:[%s2 + $0xc48] sm:$0xff]
  %v7489 = vld [vmem:[%s2 + $0xc50] sm:$0xff]
  %v7490 = vld [vmem:[%s2 + $0xc58] sm:$0xff]
  %v7491 = vld [vmem:[%s2 + $0xc60] sm:$0xff]
  %v7492 = vld [vmem:[%s2 + $0xc68] sm:$0xff]
  %v7493 = vld [vmem:[%s2 + $0xc70] sm:$0xff]
  %v7494 = vld [vmem:[%s2 + $0xc78] sm:$0xff]
  %v7495 = vld [vmem:[%s2 + $0xc80] sm:$0xff]
  %v7496 = vld [vmem:[%s2 + $0xc88] sm:$0xff]
  %v7497 = vld [vmem:[%s2 + $0xc90] sm:$0xff]
  %v7498 = vld [vmem:[%s2 + $0xc98] sm:$0xff]
  %v7499 = vld [vmem:[%s2 + $0xca0] sm:$0xff]
  %v7500 = vld [vmem:[%s2 + $0xca8] sm:$0xff]
  %v7501 = vld [vmem:[%s2 + $0xcb0] sm:$0xff]
  %v7502 = vld [vmem:[%s2 + $0xcb8] sm:$0xff]
  %v7503 = vld [vmem:[%s2 + $0xcc0] sm:$0xff]
  %v7504 = vld [vmem:[%s2 + $0xcc8] sm:$0xff]
  %v7505 = vld [vmem:[%s2 + $0xcd0] sm:$0xff]
  %v7506 = vld [vmem:[%s2 + $0xcd8] sm:$0xff]
  %v7507 = vld [vmem:[%s2 + $0xce0] sm:$0xff]
  %v7508 = vld [vmem:[%s2 + $0xce8] sm:$0xff]
  %v7509 = vld [vmem:[%s2 + $0xcf0] sm:$0xff]
  %v7510 = vld [vmem:[%s2 + $0xcf8] sm:$0xff]
  %v7511 = vld [vmem:[%s2 + $0xd00] sm:$0xff]
  %v7512 = vld [vmem:[%s2 + $0xd08] sm:$0xff]
  %v7513 = vld [vmem:[%s2 + $0xd10] sm:$0xff]
  %v7514 = vld [vmem:[%s2 + $0xd18] sm:$0xff]
  %v7515 = vld [vmem:[%s2 + $0xd20] sm:$0xff]
  %v7516 = vld [vmem:[%s2 + $0xd28] sm:$0xff]
  %v7517 = vld [vmem:[%s2 + $0xd30] sm:$0xff]
  %v7518 = vld [vmem:[%s2 + $0xd38] sm:$0xff]
  %v7519 = vld [vmem:[%s2 + $0xd40] sm:$0xff]
  %v7520 = vld [vmem:[%s2 + $0xd48] sm:$0xff]
  %v7521 = vld [vmem:[%s2 + $0xd50] sm:$0xff]
  %v7522 = vld [vmem:[%s2 + $0xd58] sm:$0xff]
  %v7523 = vld [vmem:[%s2 + $0xd60] sm:$0xff]
  %v7524 = vld [vmem:[%s2 + $0xd68] sm:$0xff]
  %v7525 = vld [vmem:[%s2 + $0xd70] sm:$0xff]
  %v7526 = vld [vmem:[%s2 + $0xd78] sm:$0xff]
  %v7527 = vld [vmem:[%s2 + $0xd80] sm:$0xff]
  %v7528 = vld [vmem:[%s2 + $0xd88] sm:$0xff]
  %v7529 = vld [vmem:[%s2 + $0xd90] sm:$0xff]
  %v7530 = vld [vmem:[%s2 + $0xd98] sm:$0xff]
  %v7531 = vld [vmem:[%s2 + $0xda0] sm:$0xff]
  %v7532 = vld [vmem:[%s2 + $0xda8] sm:$0xff]
  %v7533 = vld [vmem:[%s2 + $0xdb0] sm:$0xff]
  %v7534 = vld [vmem:[%s2 + $0xdb8] sm:$0xff]
  %v7535 = vld [vmem:[%s2 + $0xdc0] sm:$0xff]
  %v7536 = vld [vmem:[%s2 + $0xdc8] sm:$0xff]
  %v7537 = vld [vmem:[%s2 + $0xdd0] sm:$0xff]
  %v7538 = vld [vmem:[%s2 + $0xdd8] sm:$0xff]
  %v7539 = vld [vmem:[%s2 + $0xde0] sm:$0xff]
  %v7540 = vld [vmem:[%s2 + $0xde8] sm:$0xff]
  %v7541 = vld [vmem:[%s2 + $0xdf0] sm:$0xff]
  %v7542 = vld [vmem:[%s2 + $0xdf8] sm:$0xff]
  %v7543 = vld [vmem:[%s2 + $0xe00] sm:$0xff]
  %v7544 = vld [vmem:[%s2 + $0xe08] sm:$0xff]
  %v7545 = vld [vmem:[%s2 + $0xe10] sm:$0xff]
  %v7546 = vld [vmem:[%s2 + $0xe18] sm:$0xff]
  %v7547 = vld [vmem:[%s2 + $0xe20] sm:$0xff]
  %v7548 = vld [vmem:[%s2 + $0xe28] sm:$0xff]
  %v7549 = vld [vmem:[%s2 + $0xe30] sm:$0xff]
  %v7550 = vld [vmem:[%s2 + $0xe38] sm:$0xff]
  %v7551 = vld [vmem:[%s2 + $0xe40] sm:$0xff]
  %v7552 = vld [vmem:[%s2 + $0xe48] sm:$0xff]
  %v7553 = vld [vmem:[%s2 + $0xe50] sm:$0xff]
  %v7554 = vld [vmem:[%s2 + $0xe58] sm:$0xff]
  %v7555 = vld [vmem:[%s2 + $0xe60] sm:$0xff]
  %v7556 = vld [vmem:[%s2 + $0xe68] sm:$0xff]
  %v7557 = vld [vmem:[%s2 + $0xe70] sm:$0xff]
  %v7558 = vld [vmem:[%s2 + $0xe78] sm:$0xff]
  %v7559 = vld [vmem:[%s2 + $0xe80] sm:$0xff]
  %v7560 = vld [vmem:[%s2 + $0xe88] sm:$0xff]
  %v7561 = vld [vmem:[%s2 + $0xe90] sm:$0xff]
  %v7562 = vld [vmem:[%s2 + $0xe98] sm:$0xff]
  %v7563 = vld [vmem:[%s2 + $0xea0] sm:$0xff]
  %v7564 = vld [vmem:[%s2 + $0xea8] sm:$0xff]
  %v7565 = vld [vmem:[%s2 + $0xeb0] sm:$0xff]
  %v7566 = vld [vmem:[%s2 + $0xeb8] sm:$0xff]
  %v7567 = vld [vmem:[%s2 + $0xec0] sm:$0xff]
  %v7568 = vld [vmem:[%s2 + $0xec8] sm:$0xff]
  %v7569 = vld [vmem:[%s2 + $0xed0] sm:$0xff]
  %v7570 = vld [vmem:[%s2 + $0xed8] sm:$0xff]
  %v7571 = vld [vmem:[%s2 + $0xee0] sm:$0xff]
  %v7572 = vld [vmem:[%s2 + $0xee8] sm:$0xff]
  %v7573 = vld [vmem:[%s2 + $0xef0] sm:$0xff]
  %v7574 = vld [vmem:[%s2 + $0xef8] sm:$0xff]
  %v7575 = vld [vmem:[%s2 + $0xf00] sm:$0xff]
  %v7576 = vld [vmem:[%s2 + $0xf08] sm:$0xff]
  %v7577 = vld [vmem:[%s2 + $0xf10] sm:$0xff]
  %v7578 = vld [vmem:[%s2 + $0xf18] sm:$0xff]
  %v7579 = vld [vmem:[%s2 + $0xf20] sm:$0xff]
  %v7580 = vld [vmem:[%s2 + $0xf28] sm:$0xff]
  %v7581 = vld [vmem:[%s2 + $0xf30] sm:$0xff]
  %v7582 = vld [vmem:[%s2 + $0xf38] sm:$0xff]
  %v7583 = vld [vmem:[%s2 + $0xf40] sm:$0xff]
  %v7584 = vld [vmem:[%s2 + $0xf48] sm:$0xff]
  %v7585 = vld [vmem:[%s2 + $0xf50] sm:$0xff]
  %v7586 = vld [vmem:[%s2 + $0xf58] sm:$0xff]
  %v7587 = vld [vmem:[%s2 + $0xf60] sm:$0xff]
  %v7588 = vld [vmem:[%s2 + $0xf68] sm:$0xff]
  %v7589 = vld [vmem:[%s2 + $0xf70] sm:$0xff]
  %v7590 = vld [vmem:[%s2 + $0xf78] sm:$0xff]
  %v7591 = vld [vmem:[%s2 + $0xf80] sm:$0xff]
  %v7592 = vld [vmem:[%s2 + $0xf88] sm:$0xff]
  %v7593 = vld [vmem:[%s2 + $0xf90] sm:$0xff]
  %v7594 = vld [vmem:[%s2 + $0xf98] sm:$0xff]
  %v7595 = vld [vmem:[%s2 + $0xfa0] sm:$0xff]
  %v7596 = vld [vmem:[%s2 + $0xfa8] sm:$0xff]
  %v7597 = vld [vmem:[%s2 + $0xfb0] sm:$0xff]
  %v7598 = vld [vmem:[%s2 + $0xfb8] sm:$0xff]
  %v7599 = vld [vmem:[%s2 + $0xfc0] sm:$0xff]
  %v7600 = vld [vmem:[%s2 + $0xfc8] sm:$0xff]
  %v7601 = vld [vmem:[%s2 + $0xfd0] sm:$0xff]
  %v7602 = vld [vmem:[%s2 + $0xfd8] sm:$0xff]
  %v7603 = vld [vmem:[%s2 + $0xfe0] sm:$0xff]
  %v7604 = vld [vmem:[%s2 + $0xfe8] sm:$0xff]
  %v7605 = vld [vmem:[%s2 + $0xff0] sm:$0xff]
  %v7606 = vld [vmem:[%s2 + $0xff8] sm:$0xff]
  %7607 = vmatpush.msra.mxu0 %v7215
  %7608 = vmatpush.msra.mxu0 %v7207
  %7609 = vmatpush.msra.mxu0 %v7199
  %7610 = vmatpush.msra.mxu0 %v7191
  %7611 = vmatpush.msra.mxu0 %v7183
  %7612 = vmatpush.msra.mxu0 %v7175
  %7613 = vmatpush.msra.mxu0 %v7167
  %7614 = vmatpush.msra.mxu0 %v7159
  %7615 = vmatpush.msra.mxu0 %v7151
  %7616 = vmatpush.msra.mxu0 %v7143
  %7617 = vmatpush.msra.mxu0 %v7135
  %7618 = vmatpush.msra.mxu0 %v7127
  %7619 = vmatpush.msra.mxu0 %v7119
  %7620 = vmatpush.msra.mxu0 %v7111
  %7621 = vmatpush.msra.mxu0 %v7103
  %7622 = vmatpush.msra.mxu0 %v7095
  %7623 = vmatmul.f32.gmra.mxu0 %v7082
  %v7624 = vpop.f32.mrf.mxu0
  %v7625 = vadd.f32 0.0, %v7624
  %7626 = vdwg.mxu0
  %7627 = vmatpush.msra.mxu0 %v7343
  %7628 = vmatpush.msra.mxu0 %v7335
  %7629 = vmatpush.msra.mxu0 %v7327
  %7630 = vmatpush.msra.mxu0 %v7319
  %7631 = vmatpush.msra.mxu0 %v7311
  %7632 = vmatpush.msra.mxu0 %v7303
  %7633 = vmatpush.msra.mxu0 %v7295
  %7634 = vmatpush.msra.mxu0 %v7287
  %7635 = vmatpush.msra.mxu0 %v7279
  %7636 = vmatpush.msra.mxu0 %v7271
  %7637 = vmatpush.msra.mxu0 %v7263
  %7638 = vmatpush.msra.mxu0 %v7255
  %7639 = vmatpush.msra.mxu0 %v7247
  %7640 = vmatpush.msra.mxu0 %v7239
  %7641 = vmatpush.msra.mxu0 %v7231
  %7642 = vmatpush.msra.mxu0 %v7223
  %7643 = vmatmul.f32.gmra.mxu0 %v7083
  %v7644 = vpop.f32.mrf.mxu0
  %v7645 = vadd.f32 %v7625, %v7644
  %7646 = vdwg.mxu0
  %7647 = vmatpush.msra.mxu0 %v7471
  %7648 = vmatpush.msra.mxu0 %v7463
  %7649 = vmatpush.msra.mxu0 %v7455
  %7650 = vmatpush.msra.mxu0 %v7447
  %7651 = vmatpush.msra.mxu0 %v7439
  %7652 = vmatpush.msra.mxu0 %v7431
  %7653 = vmatpush.msra.mxu0 %v7423
  %7654 = vmatpush.msra.mxu0 %v7415
  %7655 = vmatpush.msra.mxu0 %v7407
  %7656 = vmatpush.msra.mxu0 %v7399
  %7657 = vmatpush.msra.mxu0 %v7391
  %7658 = vmatpush.msra.mxu0 %v7383
  %7659 = vmatpush.msra.mxu0 %v7375
  %7660 = vmatpush.msra.mxu0 %v7367
  %7661 = vmatpush.msra.mxu0 %v7359
  %7662 = vmatpush.msra.mxu0 %v7351
  %7663 = vmatmul.f32.gmra.mxu0 %v7084
  %v7664 = vpop.f32.mrf.mxu0
  %v7665 = vadd.f32 %v7645, %v7664
  %7666 = vdwg.mxu0
  %7667 = vmatpush.msra.mxu0 %v7599
  %7668 = vmatpush.msra.mxu0 %v7591
  %7669 = vmatpush.msra.mxu0 %v7583
  %7670 = vmatpush.msra.mxu0 %v7575
  %7671 = vmatpush.msra.mxu0 %v7567
  %7672 = vmatpush.msra.mxu0 %v7559
  %7673 = vmatpush.msra.mxu0 %v7551
  %7674 = vmatpush.msra.mxu0 %v7543
  %7675 = vmatpush.msra.mxu0 %v7535
  %7676 = vmatpush.msra.mxu0 %v7527
  %7677 = vmatpush.msra.mxu0 %v7519
  %7678 = vmatpush.msra.mxu0 %v7511
  %7679 = vmatpush.msra.mxu0 %v7503
  %7680 = vmatpush.msra.mxu0 %v7495
  %7681 = vmatpush.msra.mxu0 %v7487
  %7682 = vmatpush.msra.mxu0 %v7479
  %7683 = vmatmul.f32.gmra.mxu0 %v7085
  %v7684 = vpop.f32.mrf.mxu0
  %v7685 = vadd.f32 %v7665, %v7684
  %7686 = vdwg.mxu0
  %7687 = vmatpush.msra.mxu0 %v7216
  %7688 = vmatpush.msra.mxu0 %v7208
  %7689 = vmatpush.msra.mxu0 %v7200
  %7690 = vmatpush.msra.mxu0 %v7192
  %7691 = vmatpush.msra.mxu0 %v7184
  %7692 = vmatpush.msra.mxu0 %v7176
  %7693 = vmatpush.msra.mxu0 %v7168
  %7694 = vmatpush.msra.mxu0 %v7160
  %7695 = vmatpush.msra.mxu0 %v7152
  %7696 = vmatpush.msra.mxu0 %v7144
  %7697 = vmatpush.msra.mxu0 %v7136
  %7698 = vmatpush.msra.mxu0 %v7128
  %7699 = vmatpush.msra.mxu0 %v7120
  %7700 = vmatpush.msra.mxu0 %v7112
  %7701 = vmatpush.msra.mxu0 %v7104
  %7702 = vmatpush.msra.mxu0 %v7096
  %7703 = vmatmul.f32.gmra.mxu0 %v7082
  %v7704 = vpop.f32.mrf.mxu0
  %v7705 = vadd.f32 0.0, %v7704
  %7706 = vdwg.mxu0
  %7707 = vmatpush.msra.mxu0 %v7344
  %7708 = vmatpush.msra.mxu0 %v7336
  %7709 = vmatpush.msra.mxu0 %v7328
  %7710 = vmatpush.msra.mxu0 %v7320
  %7711 = vmatpush.msra.mxu0 %v7312
  %7712 = vmatpush.msra.mxu0 %v7304
  %7713 = vmatpush.msra.mxu0 %v7296
  %7714 = vmatpush.msra.mxu0 %v7288
  %7715 = vmatpush.msra.mxu0 %v7280
  %7716 = vmatpush.msra.mxu0 %v7272
  %7717 = vmatpush.msra.mxu0 %v7264
  %7718 = vmatpush.msra.mxu0 %v7256
  %7719 = vmatpush.msra.mxu0 %v7248
  %7720 = vmatpush.msra.mxu0 %v7240
  %7721 = vmatpush.msra.mxu0 %v7232
  %7722 = vmatpush.msra.mxu0 %v7224
  %7723 = vmatmul.f32.gmra.mxu0 %v7083
  %v7724 = vpop.f32.mrf.mxu0
  %v7725 = vadd.f32 %v7705, %v7724
  %7726 = vdwg.mxu0
  %7727 = vmatpush.msra.mxu0 %v7472
  %7728 = vmatpush.msra.mxu0 %v7464
  %7729 = vmatpush.msra.mxu0 %v7456
  %7730 = vmatpush.msra.mxu0 %v7448
  %7731 = vmatpush.msra.mxu0 %v7440
  %7732 = vmatpush.msra.mxu0 %v7432
  %7733 = vmatpush.msra.mxu0 %v7424
  %7734 = vmatpush.msra.mxu0 %v7416
  %7735 = vmatpush.msra.mxu0 %v7408
  %7736 = vmatpush.msra.mxu0 %v7400
  %7737 = vmatpush.msra.mxu0 %v7392
  %7738 = vmatpush.msra.mxu0 %v7384
  %7739 = vmatpush.msra.mxu0 %v7376
  %7740 = vmatpush.msra.mxu0 %v7368
  %7741 = vmatpush.msra.mxu0 %v7360
  %7742 = vmatpush.msra.mxu0 %v7352
  %7743 = vmatmul.f32.gmra.mxu0 %v7084
  %v7744 = vpop.f32.mrf.mxu0
  %v7745 = vadd.f32 %v7725, %v7744
  %7746 = vdwg.mxu0
  %7747 = vmatpush.msra.mxu0 %v7600
  %7748 = vmatpush.msra.mxu0 %v7592
  %7749 = vmatpush.msra.mxu0 %v7584
  %7750 = vmatpush.msra.mxu0 %v7576
  %7751 = vmatpush.msra.mxu0 %v7568
  %7752 = vmatpush.msra.mxu0 %v7560
  %7753 = vmatpush.msra.mxu0 %v7552
  %7754 = vmatpush.msra.mxu0 %v7544
  %7755 = vmatpush.msra.mxu0 %v7536
  %7756 = vmatpush.msra.mxu0 %v7528
  %7757 = vmatpush.msra.mxu0 %v7520
  %7758 = vmatpush.msra.mxu0 %v7512
  %7759 = vmatpush.msra.mxu0 %v7504
  %7760 = vmatpush.msra.mxu0 %v7496
  %7761 = vmatpush.msra.mxu0 %v7488
  %7762 = vmatpush.msra.mxu0 %v7480
  %7763 = vmatmul.f32.gmra.mxu0 %v7085
  %v7764 = vpop.f32.mrf.mxu0
  %v7765 = vadd.f32 %v7745, %v7764
  %7766 = vdwg.mxu0
  %7767 = vmatpush.msra.mxu0 %v7217
  %7768 = vmatpush.msra.mxu0 %v7209
  %7769 = vmatpush.msra.mxu0 %v7201
  %7770 = vmatpush.msra.mxu0 %v7193
  %7771 = vmatpush.msra.mxu0 %v7185
  %7772 = vmatpush.msra.mxu0 %v7177
  %7773 = vmatpush.msra.mxu0 %v7169
  %7774 = vmatpush.msra.mxu0 %v7161
  %7775 = vmatpush.msra.mxu0 %v7153
  %7776 = vmatpush.msra.mxu0 %v7145
  %7777 = vmatpush.msra.mxu0 %v7137
  %7778 = vmatpush.msra.mxu0 %v7129
  %7779 = vmatpush.msra.mxu0 %v7121
  %7780 = vmatpush.msra.mxu0 %v7113
  %7781 = vmatpush.msra.mxu0 %v7105
  %7782 = vmatpush.msra.mxu0 %v7097
  %7783 = vmatmul.f32.gmra.mxu0 %v7082
  %v7784 = vpop.f32.mrf.mxu0
  %v7785 = vadd.f32 0.0, %v7784
  %7786 = vdwg.mxu0
  %7787 = vmatpush.msra.mxu0 %v7345
  %7788 = vmatpush.msra.mxu0 %v7337
  %7789 = vmatpush.msra.mxu0 %v7329
  %7790 = vmatpush.msra.mxu0 %v7321
  %7791 = vmatpush.msra.mxu0 %v7313
  %7792 = vmatpush.msra.mxu0 %v7305
  %7793 = vmatpush.msra.mxu0 %v7297
  %7794 = vmatpush.msra.mxu0 %v7289
  %7795 = vmatpush.msra.mxu0 %v7281
  %7796 = vmatpush.msra.mxu0 %v7273
  %7797 = vmatpush.msra.mxu0 %v7265
  %7798 = vmatpush.msra.mxu0 %v7257
  %7799 = vmatpush.msra.mxu0 %v7249
  %7800 = vmatpush.msra.mxu0 %v7241
  %7801 = vmatpush.msra.mxu0 %v7233
  %7802 = vmatpush.msra.mxu0 %v7225
  %7803 = vmatmul.f32.gmra.mxu0 %v7083
  %v7804 = vpop.f32.mrf.mxu0
  %v7805 = vadd.f32 %v7785, %v7804
  %7806 = vdwg.mxu0
  %7807 = vmatpush.msra.mxu0 %v7473
  %7808 = vmatpush.msra.mxu0 %v7465
  %7809 = vmatpush.msra.mxu0 %v7457
  %7810 = vmatpush.msra.mxu0 %v7449
  %7811 = vmatpush.msra.mxu0 %v7441
  %7812 = vmatpush.msra.mxu0 %v7433
  %7813 = vmatpush.msra.mxu0 %v7425
  %7814 = vmatpush.msra.mxu0 %v7417
  %7815 = vmatpush.msra.mxu0 %v7409
  %7816 = vmatpush.msra.mxu0 %v7401
  %7817 = vmatpush.msra.mxu0 %v7393
  %7818 = vmatpush.msra.mxu0 %v7385
  %7819 = vmatpush.msra.mxu0 %v7377
  %7820 = vmatpush.msra.mxu0 %v7369
  %7821 = vmatpush.msra.mxu0 %v7361
  %7822 = vmatpush.msra.mxu0 %v7353
  %7823 = vmatmul.f32.gmra.mxu0 %v7084
  %v7824 = vpop.f32.mrf.mxu0
  %v7825 = vadd.f32 %v7805, %v7824
  %7826 = vdwg.mxu0
  %7827 = vmatpush.msra.mxu0 %v7601
  %7828 = vmatpush.msra.mxu0 %v7593
  %7829 = vmatpush.msra.mxu0 %v7585
  %7830 = vmatpush.msra.mxu0 %v7577
  %7831 = vmatpush.msra.mxu0 %v7569
  %7832 = vmatpush.msra.mxu0 %v7561
  %7833 = vmatpush.msra.mxu0 %v7553
  %7834 = vmatpush.msra.mxu0 %v7545
  %7835 = vmatpush.msra.mxu0 %v7537
  %7836 = vmatpush.msra.mxu0 %v7529
  %7837 = vmatpush.msra.mxu0 %v7521
  %7838 = vmatpush.msra.mxu0 %v7513
  %7839 = vmatpush.msra.mxu0 %v7505
  %7840 = vmatpush.msra.mxu0 %v7497
  %7841 = vmatpush.msra.mxu0 %v7489
  %7842 = vmatpush.msra.mxu0 %v7481
  %7843 = vmatmul.f32.gmra.mxu0 %v7085
  %v7844 = vpop.f32.mrf.mxu0
  %v7845 = vadd.f32 %v7825, %v7844
  %7846 = vdwg.mxu0
  %7847 = vmatpush.msra.mxu0 %v7218
  %7848 = vmatpush.msra.mxu0 %v7210
  %7849 = vmatpush.msra.mxu0 %v7202
  %7850 = vmatpush.msra.mxu0 %v7194
  %7851 = vmatpush.msra.mxu0 %v7186
  %7852 = vmatpush.msra.mxu0 %v7178
  %7853 = vmatpush.msra.mxu0 %v7170
  %7854 = vmatpush.msra.mxu0 %v7162
  %7855 = vmatpush.msra.mxu0 %v7154
  %7856 = vmatpush.msra.mxu0 %v7146
  %7857 = vmatpush.msra.mxu0 %v7138
  %7858 = vmatpush.msra.mxu0 %v7130
  %7859 = vmatpush.msra.mxu0 %v7122
  %7860 = vmatpush.msra.mxu0 %v7114
  %7861 = vmatpush.msra.mxu0 %v7106
  %7862 = vmatpush.msra.mxu0 %v7098
  %7863 = vmatmul.f32.gmra.mxu0 %v7082
  %v7864 = vpop.f32.mrf.mxu0
  %v7865 = vadd.f32 0.0, %v7864
  %7866 = vdwg.mxu0
  %7867 = vmatpush.msra.mxu0 %v7346
  %7868 = vmatpush.msra.mxu0 %v7338
  %7869 = vmatpush.msra.mxu0 %v7330
  %7870 = vmatpush.msra.mxu0 %v7322
  %7871 = vmatpush.msra.mxu0 %v7314
  %7872 = vmatpush.msra.mxu0 %v7306
  %7873 = vmatpush.msra.mxu0 %v7298
  %7874 = vmatpush.msra.mxu0 %v7290
  %7875 = vmatpush.msra.mxu0 %v7282
  %7876 = vmatpush.msra.mxu0 %v7274
  %7877 = vmatpush.msra.mxu0 %v7266
  %7878 = vmatpush.msra.mxu0 %v7258
  %7879 = vmatpush.msra.mxu0 %v7250
  %7880 = vmatpush.msra.mxu0 %v7242
  %7881 = vmatpush.msra.mxu0 %v7234
  %7882 = vmatpush.msra.mxu0 %v7226
  %7883 = vmatmul.f32.gmra.mxu0 %v7083
  %v7884 = vpop.f32.mrf.mxu0
  %v7885 = vadd.f32 %v7865, %v7884
  %7886 = vdwg.mxu0
  %7887 = vmatpush.msra.mxu0 %v7474
  %7888 = vmatpush.msra.mxu0 %v7466
  %7889 = vmatpush.msra.mxu0 %v7458
  %7890 = vmatpush.msra.mxu0 %v7450
  %7891 = vmatpush.msra.mxu0 %v7442
  %7892 = vmatpush.msra.mxu0 %v7434
  %7893 = vmatpush.msra.mxu0 %v7426
  %7894 = vmatpush.msra.mxu0 %v7418
  %7895 = vmatpush.msra.mxu0 %v7410
  %7896 = vmatpush.msra.mxu0 %v7402
  %7897 = vmatpush.msra.mxu0 %v7394
  %7898 = vmatpush.msra.mxu0 %v7386
  %7899 = vmatpush.msra.mxu0 %v7378
  %7900 = vmatpush.msra.mxu0 %v7370
  %7901 = vmatpush.msra.mxu0 %v7362
  %7902 = vmatpush.msra.mxu0 %v7354
  %7903 = vmatmul.f32.gmra.mxu0 %v7084
  %v7904 = vpop.f32.mrf.mxu0
  %v7905 = vadd.f32 %v7885, %v7904
  %7906 = vdwg.mxu0
  %7907 = vmatpush.msra.mxu0 %v7602
  %7908 = vmatpush.msra.mxu0 %v7594
  %7909 = vmatpush.msra.mxu0 %v7586
  %7910 = vmatpush.msra.mxu0 %v7578
  %7911 = vmatpush.msra.mxu0 %v7570
  %7912 = vmatpush.msra.mxu0 %v7562
  %7913 = vmatpush.msra.mxu0 %v7554
  %7914 = vmatpush.msra.mxu0 %v7546
  %7915 = vmatpush.msra.mxu0 %v7538
  %7916 = vmatpush.msra.mxu0 %v7530
  %7917 = vmatpush.msra.mxu0 %v7522
  %7918 = vmatpush.msra.mxu0 %v7514
  %7919 = vmatpush.msra.mxu0 %v7506
  %7920 = vmatpush.msra.mxu0 %v7498
  %7921 = vmatpush.msra.mxu0 %v7490
  %7922 = vmatpush.msra.mxu0 %v7482
  %7923 = vmatmul.f32.gmra.mxu0 %v7085
  %v7924 = vpop.f32.mrf.mxu0
  %v7925 = vadd.f32 %v7905, %v7924
  %7926 = vdwg.mxu0
  %7927 = vmatpush.msra.mxu0 %v7219
  %7928 = vmatpush.msra.mxu0 %v7211
  %7929 = vmatpush.msra.mxu0 %v7203
  %7930 = vmatpush.msra.mxu0 %v7195
  %7931 = vmatpush.msra.mxu0 %v7187
  %7932 = vmatpush.msra.mxu0 %v7179
  %7933 = vmatpush.msra.mxu0 %v7171
  %7934 = vmatpush.msra.mxu0 %v7163
  %7935 = vmatpush.msra.mxu0 %v7155
  %7936 = vmatpush.msra.mxu0 %v7147
  %7937 = vmatpush.msra.mxu0 %v7139
  %7938 = vmatpush.msra.mxu0 %v7131
  %7939 = vmatpush.msra.mxu0 %v7123
  %7940 = vmatpush.msra.mxu0 %v7115
  %7941 = vmatpush.msra.mxu0 %v7107
  %7942 = vmatpush.msra.mxu0 %v7099
  %7943 = vmatmul.f32.gmra.mxu0 %v7082
  %v7944 = vpop.f32.mrf.mxu0
  %v7945 = vadd.f32 0.0, %v7944
  %7946 = vdwg.mxu0
  %7947 = vmatpush.msra.mxu0 %v7347
  %7948 = vmatpush.msra.mxu0 %v7339
  %7949 = vmatpush.msra.mxu0 %v7331
  %7950 = vmatpush.msra.mxu0 %v7323
  %7951 = vmatpush.msra.mxu0 %v7315
  %7952 = vmatpush.msra.mxu0 %v7307
  %7953 = vmatpush.msra.mxu0 %v7299
  %7954 = vmatpush.msra.mxu0 %v7291
  %7955 = vmatpush.msra.mxu0 %v7283
  %7956 = vmatpush.msra.mxu0 %v7275
  %7957 = vmatpush.msra.mxu0 %v7267
  %7958 = vmatpush.msra.mxu0 %v7259
  %7959 = vmatpush.msra.mxu0 %v7251
  %7960 = vmatpush.msra.mxu0 %v7243
  %7961 = vmatpush.msra.mxu0 %v7235
  %7962 = vmatpush.msra.mxu0 %v7227
  %7963 = vmatmul.f32.gmra.mxu0 %v7083
  %v7964 = vpop.f32.mrf.mxu0
  %v7965 = vadd.f32 %v7945, %v7964
  %7966 = vdwg.mxu0
  %7967 = vmatpush.msra.mxu0 %v7475
  %7968 = vmatpush.msra.mxu0 %v7467
  %7969 = vmatpush.msra.mxu0 %v7459
  %7970 = vmatpush.msra.mxu0 %v7451
  %7971 = vmatpush.msra.mxu0 %v7443
  %7972 = vmatpush.msra.mxu0 %v7435
  %7973 = vmatpush.msra.mxu0 %v7427
  %7974 = vmatpush.msra.mxu0 %v7419
  %7975 = vmatpush.msra.mxu0 %v7411
  %7976 = vmatpush.msra.mxu0 %v7403
  %7977 = vmatpush.msra.mxu0 %v7395
  %7978 = vmatpush.msra.mxu0 %v7387
  %7979 = vmatpush.msra.mxu0 %v7379
  %7980 = vmatpush.msra.mxu0 %v7371
  %7981 = vmatpush.msra.mxu0 %v7363
  %7982 = vmatpush.msra.mxu0 %v7355
  %7983 = vmatmul.f32.gmra.mxu0 %v7084
  %v7984 = vpop.f32.mrf.mxu0
  %v7985 = vadd.f32 %v7965, %v7984
  %7986 = vdwg.mxu0
  %7987 = vmatpush.msra.mxu0 %v7603
  %7988 = vmatpush.msra.mxu0 %v7595
  %7989 = vmatpush.msra.mxu0 %v7587
  %7990 = vmatpush.msra.mxu0 %v7579
  %7991 = vmatpush.msra.mxu0 %v7571
  %7992 = vmatpush.msra.mxu0 %v7563
  %7993 = vmatpush.msra.mxu0 %v7555
  %7994 = vmatpush.msra.mxu0 %v7547
  %7995 = vmatpush.msra.mxu0 %v7539
  %7996 = vmatpush.msra.mxu0 %v7531
  %7997 = vmatpush.msra.mxu0 %v7523
  %7998 = vmatpush.msra.mxu0 %v7515
  %7999 = vmatpush.msra.mxu0 %v7507
  %8000 = vmatpush.msra.mxu0 %v7499
  %8001 = vmatpush.msra.mxu0 %v7491
  %8002 = vmatpush.msra.mxu0 %v7483
  %8003 = vmatmul.f32.gmra.mxu0 %v7085
  %v8004 = vpop.f32.mrf.mxu0
  %v8005 = vadd.f32 %v7985, %v8004
  %8006 = vdwg.mxu0
  %8007 = vmatpush.msra.mxu0 %v7220
  %8008 = vmatpush.msra.mxu0 %v7212
  %8009 = vmatpush.msra.mxu0 %v7204
  %8010 = vmatpush.msra.mxu0 %v7196
  %8011 = vmatpush.msra.mxu0 %v7188
  %8012 = vmatpush.msra.mxu0 %v7180
  %8013 = vmatpush.msra.mxu0 %v7172
  %8014 = vmatpush.msra.mxu0 %v7164
  %8015 = vmatpush.msra.mxu0 %v7156
  %8016 = vmatpush.msra.mxu0 %v7148
  %8017 = vmatpush.msra.mxu0 %v7140
  %8018 = vmatpush.msra.mxu0 %v7132
  %8019 = vmatpush.msra.mxu0 %v7124
  %8020 = vmatpush.msra.mxu0 %v7116
  %8021 = vmatpush.msra.mxu0 %v7108
  %8022 = vmatpush.msra.mxu0 %v7100
  %8023 = vmatmul.f32.gmra.mxu0 %v7082
  %v8024 = vpop.f32.mrf.mxu0
  %v8025 = vadd.f32 0.0, %v8024
  %8026 = vdwg.mxu0
  %8027 = vmatpush.msra.mxu0 %v7348
  %8028 = vmatpush.msra.mxu0 %v7340
  %8029 = vmatpush.msra.mxu0 %v7332
  %8030 = vmatpush.msra.mxu0 %v7324
  %8031 = vmatpush.msra.mxu0 %v7316
  %8032 = vmatpush.msra.mxu0 %v7308
  %8033 = vmatpush.msra.mxu0 %v7300
  %8034 = vmatpush.msra.mxu0 %v7292
  %8035 = vmatpush.msra.mxu0 %v7284
  %8036 = vmatpush.msra.mxu0 %v7276
  %8037 = vmatpush.msra.mxu0 %v7268
  %8038 = vmatpush.msra.mxu0 %v7260
  %8039 = vmatpush.msra.mxu0 %v7252
  %8040 = vmatpush.msra.mxu0 %v7244
  %8041 = vmatpush.msra.mxu0 %v7236
  %8042 = vmatpush.msra.mxu0 %v7228
  %8043 = vmatmul.f32.gmra.mxu0 %v7083
  %v8044 = vpop.f32.mrf.mxu0
  %v8045 = vadd.f32 %v8025, %v8044
  %8046 = vdwg.mxu0
  %8047 = vmatpush.msra.mxu0 %v7476
  %8048 = vmatpush.msra.mxu0 %v7468
  %8049 = vmatpush.msra.mxu0 %v7460
  %8050 = vmatpush.msra.mxu0 %v7452
  %8051 = vmatpush.msra.mxu0 %v7444
  %8052 = vmatpush.msra.mxu0 %v7436
  %8053 = vmatpush.msra.mxu0 %v7428
  %8054 = vmatpush.msra.mxu0 %v7420
  %8055 = vmatpush.msra.mxu0 %v7412
  %8056 = vmatpush.msra.mxu0 %v7404
  %8057 = vmatpush.msra.mxu0 %v7396
  %8058 = vmatpush.msra.mxu0 %v7388
  %8059 = vmatpush.msra.mxu0 %v7380
  %8060 = vmatpush.msra.mxu0 %v7372
  %8061 = vmatpush.msra.mxu0 %v7364
  %8062 = vmatpush.msra.mxu0 %v7356
  %8063 = vmatmul.f32.gmra.mxu0 %v7084
  %v8064 = vpop.f32.mrf.mxu0
  %v8065 = vadd.f32 %v8045, %v8064
  %8066 = vdwg.mxu0
  %8067 = vmatpush.msra.mxu0 %v7604
  %8068 = vmatpush.msra.mxu0 %v7596
  %8069 = vmatpush.msra.mxu0 %v7588
  %8070 = vmatpush.msra.mxu0 %v7580
  %8071 = vmatpush.msra.mxu0 %v7572
  %8072 = vmatpush.msra.mxu0 %v7564
  %8073 = vmatpush.msra.mxu0 %v7556
  %8074 = vmatpush.msra.mxu0 %v7548
  %8075 = vmatpush.msra.mxu0 %v7540
  %8076 = vmatpush.msra.mxu0 %v7532
  %8077 = vmatpush.msra.mxu0 %v7524
  %8078 = vmatpush.msra.mxu0 %v7516
  %8079 = vmatpush.msra.mxu0 %v7508
  %8080 = vmatpush.msra.mxu0 %v7500
  %8081 = vmatpush.msra.mxu0 %v7492
  %8082 = vmatpush.msra.mxu0 %v7484
  %8083 = vmatmul.f32.gmra.mxu0 %v7085
  %v8084 = vpop.f32.mrf.mxu0
  %v8085 = vadd.f32 %v8065, %v8084
  %8086 = vdwg.mxu0
  %8087 = vmatpush.msra.mxu0 %v7221
  %8088 = vmatpush.msra.mxu0 %v7213
  %8089 = vmatpush.msra.mxu0 %v7205
  %8090 = vmatpush.msra.mxu0 %v7197
  %8091 = vmatpush.msra.mxu0 %v7189
  %8092 = vmatpush.msra.mxu0 %v7181
  %8093 = vmatpush.msra.mxu0 %v7173
  %8094 = vmatpush.msra.mxu0 %v7165
  %8095 = vmatpush.msra.mxu0 %v7157
  %8096 = vmatpush.msra.mxu0 %v7149
  %8097 = vmatpush.msra.mxu0 %v7141
  %8098 = vmatpush.msra.mxu0 %v7133
  %8099 = vmatpush.msra.mxu0 %v7125
  %8100 = vmatpush.msra.mxu0 %v7117
  %8101 = vmatpush.msra.mxu0 %v7109
  %8102 = vmatpush.msra.mxu0 %v7101
  %8103 = vmatmul.f32.gmra.mxu0 %v7082
  %v8104 = vpop.f32.mrf.mxu0
  %v8105 = vadd.f32 0.0, %v8104
  %8106 = vdwg.mxu0
  %8107 = vmatpush.msra.mxu0 %v7349
  %8108 = vmatpush.msra.mxu0 %v7341
  %8109 = vmatpush.msra.mxu0 %v7333
  %8110 = vmatpush.msra.mxu0 %v7325
  %8111 = vmatpush.msra.mxu0 %v7317
  %8112 = vmatpush.msra.mxu0 %v7309
  %8113 = vmatpush.msra.mxu0 %v7301
  %8114 = vmatpush.msra.mxu0 %v7293
  %8115 = vmatpush.msra.mxu0 %v7285
  %8116 = vmatpush.msra.mxu0 %v7277
  %8117 = vmatpush.msra.mxu0 %v7269
  %8118 = vmatpush.msra.mxu0 %v7261
  %8119 = vmatpush.msra.mxu0 %v7253
  %8120 = vmatpush.msra.mxu0 %v7245
  %8121 = vmatpush.msra.mxu0 %v7237
  %8122 = vmatpush.msra.mxu0 %v7229
  %8123 = vmatmul.f32.gmra.mxu0 %v7083
  %v8124 = vpop.f32.mrf.mxu0
  %v8125 = vadd.f32 %v8105, %v8124
  %8126 = vdwg.mxu0
  %8127 = vmatpush.msra.mxu0 %v7477
  %8128 = vmatpush.msra.mxu0 %v7469
  %8129 = vmatpush.msra.mxu0 %v7461
  %8130 = vmatpush.msra.mxu0 %v7453
  %8131 = vmatpush.msra.mxu0 %v7445
  %8132 = vmatpush.msra.mxu0 %v7437
  %8133 = vmatpush.msra.mxu0 %v7429
  %8134 = vmatpush.msra.mxu0 %v7421
  %8135 = vmatpush.msra.mxu0 %v7413
  %8136 = vmatpush.msra.mxu0 %v7405
  %8137 = vmatpush.msra.mxu0 %v7397
  %8138 = vmatpush.msra.mxu0 %v7389
  %8139 = vmatpush.msra.mxu0 %v7381
  %8140 = vmatpush.msra.mxu0 %v7373
  %8141 = vmatpush.msra.mxu0 %v7365
  %8142 = vmatpush.msra.mxu0 %v7357
  %8143 = vmatmul.f32.gmra.mxu0 %v7084
  %v8144 = vpop.f32.mrf.mxu0
  %v8145 = vadd.f32 %v8125, %v8144
  %8146 = vdwg.mxu0
  %8147 = vmatpush.msra.mxu0 %v7605
  %8148 = vmatpush.msra.mxu0 %v7597
  %8149 = vmatpush.msra.mxu0 %v7589
  %8150 = vmatpush.msra.mxu0 %v7581
  %8151 = vmatpush.msra.mxu0 %v7573
  %8152 = vmatpush.msra.mxu0 %v7565
  %8153 = vmatpush.msra.mxu0 %v7557
  %8154 = vmatpush.msra.mxu0 %v7549
  %8155 = vmatpush.msra.mxu0 %v7541
  %8156 = vmatpush.msra.mxu0 %v7533
  %8157 = vmatpush.msra.mxu0 %v7525
  %8158 = vmatpush.msra.mxu0 %v7517
  %8159 = vmatpush.msra.mxu0 %v7509
  %8160 = vmatpush.msra.mxu0 %v7501
  %8161 = vmatpush.msra.mxu0 %v7493
  %8162 = vmatpush.msra.mxu0 %v7485
  %8163 = vmatmul.f32.gmra.mxu0 %v7085
  %v8164 = vpop.f32.mrf.mxu0
  %v8165 = vadd.f32 %v8145, %v8164
  %8166 = vdwg.mxu0
  %8167 = vmatpush.msra.mxu0 %v7222
  %8168 = vmatpush.msra.mxu0 %v7214
  %8169 = vmatpush.msra.mxu0 %v7206
  %8170 = vmatpush.msra.mxu0 %v7198
  %8171 = vmatpush.msra.mxu0 %v7190
  %8172 = vmatpush.msra.mxu0 %v7182
  %8173 = vmatpush.msra.mxu0 %v7174
  %8174 = vmatpush.msra.mxu0 %v7166
  %8175 = vmatpush.msra.mxu0 %v7158
  %8176 = vmatpush.msra.mxu0 %v7150
  %8177 = vmatpush.msra.mxu0 %v7142
  %8178 = vmatpush.msra.mxu0 %v7134
  %8179 = vmatpush.msra.mxu0 %v7126
  %8180 = vmatpush.msra.mxu0 %v7118
  %8181 = vmatpush.msra.mxu0 %v7110
  %8182 = vmatpush.msra.mxu0 %v7102
  %8183 = vmatmul.f32.gmra.mxu0 %v7082
  %v8184 = vpop.f32.mrf.mxu0
  %v8185 = vadd.f32 0.0, %v8184
  %8186 = vdwg.mxu0
  %8187 = vmatpush.msra.mxu0 %v7350
  %8188 = vmatpush.msra.mxu0 %v7342
  %8189 = vmatpush.msra.mxu0 %v7334
  %8190 = vmatpush.msra.mxu0 %v7326
  %8191 = vmatpush.msra.mxu0 %v7318
  %8192 = vmatpush.msra.mxu0 %v7310
  %8193 = vmatpush.msra.mxu0 %v7302
  %8194 = vmatpush.msra.mxu0 %v7294
  %8195 = vmatpush.msra.mxu0 %v7286
  %8196 = vmatpush.msra.mxu0 %v7278
  %8197 = vmatpush.msra.mxu0 %v7270
  %8198 = vmatpush.msra.mxu0 %v7262
  %8199 = vmatpush.msra.mxu0 %v7254
  %8200 = vmatpush.msra.mxu0 %v7246
  %8201 = vmatpush.msra.mxu0 %v7238
  %8202 = vmatpush.msra.mxu0 %v7230
  %8203 = vmatmul.f32.gmra.mxu0 %v7083
  %v8204 = vpop.f32.mrf.mxu0
  %v8205 = vadd.f32 %v8185, %v8204
  %8206 = vdwg.mxu0
  %8207 = vmatpush.msra.mxu0 %v7478
  %8208 = vmatpush.msra.mxu0 %v7470
  %8209 = vmatpush.msra.mxu0 %v7462
  %8210 = vmatpush.msra.mxu0 %v7454
  %8211 = vmatpush.msra.mxu0 %v7446
  %8212 = vmatpush.msra.mxu0 %v7438
  %8213 = vmatpush.msra.mxu0 %v7430
  %8214 = vmatpush.msra.mxu0 %v7422
  %8215 = vmatpush.msra.mxu0 %v7414
  %8216 = vmatpush.msra.mxu0 %v7406
  %8217 = vmatpush.msra.mxu0 %v7398
  %8218 = vmatpush.msra.mxu0 %v7390
  %8219 = vmatpush.msra.mxu0 %v7382
  %8220 = vmatpush.msra.mxu0 %v7374
  %8221 = vmatpush.msra.mxu0 %v7366
  %8222 = vmatpush.msra.mxu0 %v7358
  %8223 = vmatmul.f32.gmra.mxu0 %v7084
  %v8224 = vpop.f32.mrf.mxu0
  %v8225 = vadd.f32 %v8205, %v8224
  %8226 = vdwg.mxu0
  %8227 = vmatpush.msra.mxu0 %v7606
  %8228 = vmatpush.msra.mxu0 %v7598
  %8229 = vmatpush.msra.mxu0 %v7590
  %8230 = vmatpush.msra.mxu0 %v7582
  %8231 = vmatpush.msra.mxu0 %v7574
  %8232 = vmatpush.msra.mxu0 %v7566
  %8233 = vmatpush.msra.mxu0 %v7558
  %8234 = vmatpush.msra.mxu0 %v7550
  %8235 = vmatpush.msra.mxu0 %v7542
  %8236 = vmatpush.msra.mxu0 %v7534
  %8237 = vmatpush.msra.mxu0 %v7526
  %8238 = vmatpush.msra.mxu0 %v7518
  %8239 = vmatpush.msra.mxu0 %v7510
  %8240 = vmatpush.msra.mxu0 %v7502
  %8241 = vmatpush.msra.mxu0 %v7494
  %8242 = vmatpush.msra.mxu0 %v7486
  %8243 = vmatmul.f32.gmra.mxu0 %v7085
  %v8244 = vpop.f32.mrf.mxu0
  %v8245 = vadd.f32 %v8225, %v8244
  %8246 = vdwg.mxu0
  %v8247 = vadd.f32 %v7087, %v7685
  %v8248 = vadd.f32 %v7088, %v7765
  %v8249 = vadd.f32 %v7089, %v7845
  %v8250 = vadd.f32 %v7090, %v7925
  %v8251 = vadd.f32 %v7091, %v8005
  %v8252 = vadd.f32 %v7092, %v8085
  %v8253 = vadd.f32 %v7093, %v8165
  %v8254 = vadd.f32 %v7094, %v8245
  %v8255 = vxor.u32 %v8247, 2147483648
  %v8256 = vxor.u32 %v8248, 2147483648
  %v8257 = vxor.u32 %v8249, 2147483648
  %v8258 = vxor.u32 %v8250, 2147483648
  %v8259 = vxor.u32 %v8251, 2147483648
  %v8260 = vxor.u32 %v8252, 2147483648
  %v8261 = vmul.f32 %v8255, 1.442695
  %v8262 = vpow.pop %v8261
  %v8263 = vmul.f32 %v8256, 1.442695
  %v8264 = vpow.pop %v8263
  %v8265 = vmul.f32 %v8257, 1.442695
  %v8266 = vpow.pop %v8265
  %v8267 = vmul.f32 %v8258, 1.442695
  %v8268 = vpow.pop %v8267
  %v8269 = vmul.f32 %v8259, 1.442695
  %v8270 = vpow.pop %v8269
  %v8271 = vmul.f32 %v8260, 1.442695
  %v8272 = vpow.pop %v8271
  %v8273 = vadd.f32 %v8262, 1.0
  %v8274 = vadd.f32 %v8264, 1.0
  %v8275 = vadd.f32 %v8266, 1.0
  %v8276 = vadd.f32 %v8268, 1.0
  %v8277 = vadd.f32 %v8270, 1.0
  %v8278 = vadd.f32 %v8272, 1.0
  %v8279 = vrcp.pop %v8273
  %v8280 = vmul.f32 %v8273, %v8279
  %v8281 = vsub.f32 1.0, %v8280
  %v8282 = vmul.f32 %v8279, %v8281
  %v8283 = vadd.f32 %v8279, %v8282
  %vm8284 = vweird.f32 %v8273
  %vm8285 = vweird.f32 %v8279
  %vm8286 = vmor %vm8284, %vm8285
  %v8287 = vsel %vm8286, %v8279, %v8283
  %v8288 = vand.u32 2147483647, %v8273
  %vm8289 = vcmp.eq.f32.partialorder %v8288, 8.507059e+37
  %v8290 = vand.u32 %v8273, 2147483648
  %v8291 = vor.u32 1.1754944e-38, %v8290
  %v8292 = vsel %vm8289, %v8291, %v8287
  %v8293 = vmul.f32 1.0, %v8292
  %v8294 = vrcp.pop %v8274
  %v8295 = vmul.f32 %v8274, %v8294
  %v8296 = vsub.f32 1.0, %v8295
  %v8297 = vmul.f32 %v8294, %v8296
  %v8298 = vadd.f32 %v8294, %v8297
  %vm8299 = vweird.f32 %v8274
  %vm8300 = vweird.f32 %v8294
  %vm8301 = vmor %vm8299, %vm8300
  %v8302 = vsel %vm8301, %v8294, %v8298
  %v8303 = vand.u32 2147483647, %v8274
  %vm8304 = vcmp.eq.f32.partialorder %v8303, 8.507059e+37
  %v8305 = vand.u32 %v8274, 2147483648
  %v8306 = vor.u32 1.1754944e-38, %v8305
  %v8307 = vsel %vm8304, %v8306, %v8302
  %v8308 = vmul.f32 1.0, %v8307
  %v8309 = vrcp.pop %v8275
  %v8310 = vmul.f32 %v8275, %v8309
  %v8311 = vsub.f32 1.0, %v8310
  %v8312 = vmul.f32 %v8309, %v8311
  %v8313 = vadd.f32 %v8309, %v8312
  %vm8314 = vweird.f32 %v8275
  %vm8315 = vweird.f32 %v8309
  %vm8316 = vmor %vm8314, %vm8315
  %v8317 = vsel %vm8316, %v8309, %v8313
  %v8318 = vand.u32 2147483647, %v8275
  %vm8319 = vcmp.eq.f32.partialorder %v8318, 8.507059e+37
  %v8320 = vand.u32 %v8275, 2147483648
  %v8321 = vor.u32 1.1754944e-38, %v8320
  %v8322 = vsel %vm8319, %v8321, %v8317
  %v8323 = vmul.f32 1.0, %v8322
  %v8324 = vrcp.pop %v8276
  %v8325 = vmul.f32 %v8276, %v8324
  %v8326 = vsub.f32 1.0, %v8325
  %v8327 = vmul.f32 %v8324, %v8326
  %v8328 = vadd.f32 %v8324, %v8327
  %vm8329 = vweird.f32 %v8276
  %vm8330 = vweird.f32 %v8324
  %vm8331 = vmor %vm8329, %vm8330
  %v8332 = vsel %vm8331, %v8324, %v8328
  %v8333 = vand.u32 2147483647, %v8276
  %vm8334 = vcmp.eq.f32.partialorder %v8333, 8.507059e+37
  %v8335 = vand.u32 %v8276, 2147483648
  %v8336 = vor.u32 1.1754944e-38, %v8335
  %v8337 = vsel %vm8334, %v8336, %v8332
  %v8338 = vmul.f32 1.0, %v8337
  %v8339 = vrcp.pop %v8277
  %v8340 = vmul.f32 %v8277, %v8339
  %v8341 = vsub.f32 1.0, %v8340
  %v8342 = vmul.f32 %v8339, %v8341
  %v8343 = vadd.f32 %v8339, %v8342
  %vm8344 = vweird.f32 %v8277
  %vm8345 = vweird.f32 %v8339
  %vm8346 = vmor %vm8344, %vm8345
  %v8347 = vsel %vm8346, %v8339, %v8343
  %v8348 = vand.u32 2147483647, %v8277
  %vm8349 = vcmp.eq.f32.partialorder %v8348, 8.507059e+37
  %v8350 = vand.u32 %v8277, 2147483648
  %v8351 = vor.u32 1.1754944e-38, %v8350
  %v8352 = vsel %vm8349, %v8351, %v8347
  %v8353 = vmul.f32 1.0, %v8352
  %v8354 = vrcp.pop %v8278
  %v8355 = vmul.f32 %v8278, %v8354
  %v8356 = vsub.f32 1.0, %v8355
  %v8357 = vmul.f32 %v8354, %v8356
  %v8358 = vadd.f32 %v8354, %v8357
  %vm8359 = vweird.f32 %v8278
  %vm8360 = vweird.f32 %v8354
  %vm8361 = vmor %vm8359, %vm8360
  %v8362 = vsel %vm8361, %v8354, %v8358
  %v8363 = vand.u32 2147483647, %v8278
  %vm8364 = vcmp.eq.f32.partialorder %v8363, 8.507059e+37
  %v8365 = vand.u32 %v8278, 2147483648
  %v8366 = vor.u32 1.1754944e-38, %v8365
  %v8367 = vsel %vm8364, %v8366, %v8362
  %v8368 = vmul.f32 1.0, %v8367
  %v8369 = vtanh.pop %v8253
  %v8370 = vtanh.pop %v8254
  %v8371 = vmul.f32 %v8323, %v7070
  %v8372 = vmul.f32 %v8338, %v7071
  %v8373 = vmul.f32 %v8293, %v8369
  %v8374 = vmul.f32 %v8308, %v8370
  %v8375 = vadd.f32 %v8371, %v8373
  %v8376 = vadd.f32 %v8372, %v8374
  %v8377 = vtanh.pop %v8375
  %v8378 = vtanh.pop %v8376
  %v8379 = vmul.f32 %v8353, %v8377
  %v8380 = vmul.f32 %v8368, %v8378
  %s8381 = scalar_lea.vmem [#allocation3], 80
  %8382 = vst [vmem:[%s8381] sm:$0xff] %v8379
  %8383 = vst [vmem:[%s8381 + $0x8] sm:$0xff] %v8380
  %s8384 = scalar_lea.vmem [#allocation4], 32
  %8385 = vst [vmem:[%s8384] sm:$0xff] %v8379
  %8386 = vst [vmem:[%s8384 + $0x8] sm:$0xff] %v8380
  %v8387 = vmul.f32 %v8379, %v555
  %v8388 = vmul.f32 %v8380, %v555
  %v8389 = vmul.f32 %v8379, %v560
  %v8390 = vmul.f32 %v8380, %v560
  %s8391 = scalar_lea.vmem [#allocation2], 384
  %v8392 = vld [vmem:[%s8391] sm:$0xff]
  %v8393 = vld [vmem:[%s8391 + $0x8] sm:$0xff]
  %v8394 = vld [vmem:[%s8391 + $0x10] sm:$0xff]
  %v8395 = vld [vmem:[%s8391 + $0x18] sm:$0xff]
  %v8396 = vld [vmem:[%s8391 + $0x20] sm:$0xff]
  %v8397 = vld [vmem:[%s8391 + $0x28] sm:$0xff]
  %v8398 = vld [vmem:[%s8391 + $0x30] sm:$0xff]
  %v8399 = vld [vmem:[%s8391 + $0x38] sm:$0xff]
  %v8400 = vld [vmem:[%s2] sm:$0xff]
  %v8401 = vld [vmem:[%s2 + $0x8] sm:$0xff]
  %v8402 = vld [vmem:[%s2 + $0x10] sm:$0xff]
  %v8403 = vld [vmem:[%s2 + $0x18] sm:$0xff]
  %v8404 = vld [vmem:[%s2 + $0x20] sm:$0xff]
  %v8405 = vld [vmem:[%s2 + $0x28] sm:$0xff]
  %v8406 = vld [vmem:[%s2 + $0x30] sm:$0xff]
  %v8407 = vld [vmem:[%s2 + $0x38] sm:$0xff]
  %v8408 = vld [vmem:[%s2 + $0x40] sm:$0xff]
  %v8409 = vld [vmem:[%s2 + $0x48] sm:$0xff]
  %v8410 = vld [vmem:[%s2 + $0x50] sm:$0xff]
  %v8411 = vld [vmem:[%s2 + $0x58] sm:$0xff]
  %v8412 = vld [vmem:[%s2 + $0x60] sm:$0xff]
  %v8413 = vld [vmem:[%s2 + $0x68] sm:$0xff]
  %v8414 = vld [vmem:[%s2 + $0x70] sm:$0xff]
  %v8415 = vld [vmem:[%s2 + $0x78] sm:$0xff]
  %v8416 = vld [vmem:[%s2 + $0x80] sm:$0xff]
  %v8417 = vld [vmem:[%s2 + $0x88] sm:$0xff]
  %v8418 = vld [vmem:[%s2 + $0x90] sm:$0xff]
  %v8419 = vld [vmem:[%s2 + $0x98] sm:$0xff]
  %v8420 = vld [vmem:[%s2 + $0xa0] sm:$0xff]
  %v8421 = vld [vmem:[%s2 + $0xa8] sm:$0xff]
  %v8422 = vld [vmem:[%s2 + $0xb0] sm:$0xff]
  %v8423 = vld [vmem:[%s2 + $0xb8] sm:$0xff]
  %v8424 = vld [vmem:[%s2 + $0xc0] sm:$0xff]
  %v8425 = vld [vmem:[%s2 + $0xc8] sm:$0xff]
  %v8426 = vld [vmem:[%s2 + $0xd0] sm:$0xff]
  %v8427 = vld [vmem:[%s2 + $0xd8] sm:$0xff]
  %v8428 = vld [vmem:[%s2 + $0xe0] sm:$0xff]
  %v8429 = vld [vmem:[%s2 + $0xe8] sm:$0xff]
  %v8430 = vld [vmem:[%s2 + $0xf0] sm:$0xff]
  %v8431 = vld [vmem:[%s2 + $0xf8] sm:$0xff]
  %v8432 = vld [vmem:[%s2 + $0x100] sm:$0xff]
  %v8433 = vld [vmem:[%s2 + $0x108] sm:$0xff]
  %v8434 = vld [vmem:[%s2 + $0x110] sm:$0xff]
  %v8435 = vld [vmem:[%s2 + $0x118] sm:$0xff]
  %v8436 = vld [vmem:[%s2 + $0x120] sm:$0xff]
  %v8437 = vld [vmem:[%s2 + $0x128] sm:$0xff]
  %v8438 = vld [vmem:[%s2 + $0x130] sm:$0xff]
  %v8439 = vld [vmem:[%s2 + $0x138] sm:$0xff]
  %v8440 = vld [vmem:[%s2 + $0x140] sm:$0xff]
  %v8441 = vld [vmem:[%s2 + $0x148] sm:$0xff]
  %v8442 = vld [vmem:[%s2 + $0x150] sm:$0xff]
  %v8443 = vld [vmem:[%s2 + $0x158] sm:$0xff]
  %v8444 = vld [vmem:[%s2 + $0x160] sm:$0xff]
  %v8445 = vld [vmem:[%s2 + $0x168] sm:$0xff]
  %v8446 = vld [vmem:[%s2 + $0x170] sm:$0xff]
  %v8447 = vld [vmem:[%s2 + $0x178] sm:$0xff]
  %v8448 = vld [vmem:[%s2 + $0x180] sm:$0xff]
  %v8449 = vld [vmem:[%s2 + $0x188] sm:$0xff]
  %v8450 = vld [vmem:[%s2 + $0x190] sm:$0xff]
  %v8451 = vld [vmem:[%s2 + $0x198] sm:$0xff]
  %v8452 = vld [vmem:[%s2 + $0x1a0] sm:$0xff]
  %v8453 = vld [vmem:[%s2 + $0x1a8] sm:$0xff]
  %v8454 = vld [vmem:[%s2 + $0x1b0] sm:$0xff]
  %v8455 = vld [vmem:[%s2 + $0x1b8] sm:$0xff]
  %v8456 = vld [vmem:[%s2 + $0x1c0] sm:$0xff]
  %v8457 = vld [vmem:[%s2 + $0x1c8] sm:$0xff]
  %v8458 = vld [vmem:[%s2 + $0x1d0] sm:$0xff]
  %v8459 = vld [vmem:[%s2 + $0x1d8] sm:$0xff]
  %v8460 = vld [vmem:[%s2 + $0x1e0] sm:$0xff]
  %v8461 = vld [vmem:[%s2 + $0x1e8] sm:$0xff]
  %v8462 = vld [vmem:[%s2 + $0x1f0] sm:$0xff]
  %v8463 = vld [vmem:[%s2 + $0x1f8] sm:$0xff]
  %v8464 = vld [vmem:[%s2 + $0x200] sm:$0xff]
  %v8465 = vld [vmem:[%s2 + $0x208] sm:$0xff]
  %v8466 = vld [vmem:[%s2 + $0x210] sm:$0xff]
  %v8467 = vld [vmem:[%s2 + $0x218] sm:$0xff]
  %v8468 = vld [vmem:[%s2 + $0x220] sm:$0xff]
  %v8469 = vld [vmem:[%s2 + $0x228] sm:$0xff]
  %v8470 = vld [vmem:[%s2 + $0x230] sm:$0xff]
  %v8471 = vld [vmem:[%s2 + $0x238] sm:$0xff]
  %v8472 = vld [vmem:[%s2 + $0x240] sm:$0xff]
  %v8473 = vld [vmem:[%s2 + $0x248] sm:$0xff]
  %v8474 = vld [vmem:[%s2 + $0x250] sm:$0xff]
  %v8475 = vld [vmem:[%s2 + $0x258] sm:$0xff]
  %v8476 = vld [vmem:[%s2 + $0x260] sm:$0xff]
  %v8477 = vld [vmem:[%s2 + $0x268] sm:$0xff]
  %v8478 = vld [vmem:[%s2 + $0x270] sm:$0xff]
  %v8479 = vld [vmem:[%s2 + $0x278] sm:$0xff]
  %v8480 = vld [vmem:[%s2 + $0x280] sm:$0xff]
  %v8481 = vld [vmem:[%s2 + $0x288] sm:$0xff]
  %v8482 = vld [vmem:[%s2 + $0x290] sm:$0xff]
  %v8483 = vld [vmem:[%s2 + $0x298] sm:$0xff]
  %v8484 = vld [vmem:[%s2 + $0x2a0] sm:$0xff]
  %v8485 = vld [vmem:[%s2 + $0x2a8] sm:$0xff]
  %v8486 = vld [vmem:[%s2 + $0x2b0] sm:$0xff]
  %v8487 = vld [vmem:[%s2 + $0x2b8] sm:$0xff]
  %v8488 = vld [vmem:[%s2 + $0x2c0] sm:$0xff]
  %v8489 = vld [vmem:[%s2 + $0x2c8] sm:$0xff]
  %v8490 = vld [vmem:[%s2 + $0x2d0] sm:$0xff]
  %v8491 = vld [vmem:[%s2 + $0x2d8] sm:$0xff]
  %v8492 = vld [vmem:[%s2 + $0x2e0] sm:$0xff]
  %v8493 = vld [vmem:[%s2 + $0x2e8] sm:$0xff]
  %v8494 = vld [vmem:[%s2 + $0x2f0] sm:$0xff]
  %v8495 = vld [vmem:[%s2 + $0x2f8] sm:$0xff]
  %v8496 = vld [vmem:[%s2 + $0x300] sm:$0xff]
  %v8497 = vld [vmem:[%s2 + $0x308] sm:$0xff]
  %v8498 = vld [vmem:[%s2 + $0x310] sm:$0xff]
  %v8499 = vld [vmem:[%s2 + $0x318] sm:$0xff]
  %v8500 = vld [vmem:[%s2 + $0x320] sm:$0xff]
  %v8501 = vld [vmem:[%s2 + $0x328] sm:$0xff]
  %v8502 = vld [vmem:[%s2 + $0x330] sm:$0xff]
  %v8503 = vld [vmem:[%s2 + $0x338] sm:$0xff]
  %v8504 = vld [vmem:[%s2 + $0x340] sm:$0xff]
  %v8505 = vld [vmem:[%s2 + $0x348] sm:$0xff]
  %v8506 = vld [vmem:[%s2 + $0x350] sm:$0xff]
  %v8507 = vld [vmem:[%s2 + $0x358] sm:$0xff]
  %v8508 = vld [vmem:[%s2 + $0x360] sm:$0xff]
  %v8509 = vld [vmem:[%s2 + $0x368] sm:$0xff]
  %v8510 = vld [vmem:[%s2 + $0x370] sm:$0xff]
  %v8511 = vld [vmem:[%s2 + $0x378] sm:$0xff]
  %v8512 = vld [vmem:[%s2 + $0x380] sm:$0xff]
  %v8513 = vld [vmem:[%s2 + $0x388] sm:$0xff]
  %v8514 = vld [vmem:[%s2 + $0x390] sm:$0xff]
  %v8515 = vld [vmem:[%s2 + $0x398] sm:$0xff]
  %v8516 = vld [vmem:[%s2 + $0x3a0] sm:$0xff]
  %v8517 = vld [vmem:[%s2 + $0x3a8] sm:$0xff]
  %v8518 = vld [vmem:[%s2 + $0x3b0] sm:$0xff]
  %v8519 = vld [vmem:[%s2 + $0x3b8] sm:$0xff]
  %v8520 = vld [vmem:[%s2 + $0x3c0] sm:$0xff]
  %v8521 = vld [vmem:[%s2 + $0x3c8] sm:$0xff]
  %v8522 = vld [vmem:[%s2 + $0x3d0] sm:$0xff]
  %v8523 = vld [vmem:[%s2 + $0x3d8] sm:$0xff]
  %v8524 = vld [vmem:[%s2 + $0x3e0] sm:$0xff]
  %v8525 = vld [vmem:[%s2 + $0x3e8] sm:$0xff]
  %v8526 = vld [vmem:[%s2 + $0x3f0] sm:$0xff]
  %v8527 = vld [vmem:[%s2 + $0x3f8] sm:$0xff]
  %v8528 = vld [vmem:[%s2 + $0x400] sm:$0xff]
  %v8529 = vld [vmem:[%s2 + $0x408] sm:$0xff]
  %v8530 = vld [vmem:[%s2 + $0x410] sm:$0xff]
  %v8531 = vld [vmem:[%s2 + $0x418] sm:$0xff]
  %v8532 = vld [vmem:[%s2 + $0x420] sm:$0xff]
  %v8533 = vld [vmem:[%s2 + $0x428] sm:$0xff]
  %v8534 = vld [vmem:[%s2 + $0x430] sm:$0xff]
  %v8535 = vld [vmem:[%s2 + $0x438] sm:$0xff]
  %v8536 = vld [vmem:[%s2 + $0x440] sm:$0xff]
  %v8537 = vld [vmem:[%s2 + $0x448] sm:$0xff]
  %v8538 = vld [vmem:[%s2 + $0x450] sm:$0xff]
  %v8539 = vld [vmem:[%s2 + $0x458] sm:$0xff]
  %v8540 = vld [vmem:[%s2 + $0x460] sm:$0xff]
  %v8541 = vld [vmem:[%s2 + $0x468] sm:$0xff]
  %v8542 = vld [vmem:[%s2 + $0x470] sm:$0xff]
  %v8543 = vld [vmem:[%s2 + $0x478] sm:$0xff]
  %v8544 = vld [vmem:[%s2 + $0x480] sm:$0xff]
  %v8545 = vld [vmem:[%s2 + $0x488] sm:$0xff]
  %v8546 = vld [vmem:[%s2 + $0x490] sm:$0xff]
  %v8547 = vld [vmem:[%s2 + $0x498] sm:$0xff]
  %v8548 = vld [vmem:[%s2 + $0x4a0] sm:$0xff]
  %v8549 = vld [vmem:[%s2 + $0x4a8] sm:$0xff]
  %v8550 = vld [vmem:[%s2 + $0x4b0] sm:$0xff]
  %v8551 = vld [vmem:[%s2 + $0x4b8] sm:$0xff]
  %v8552 = vld [vmem:[%s2 + $0x4c0] sm:$0xff]
  %v8553 = vld [vmem:[%s2 + $0x4c8] sm:$0xff]
  %v8554 = vld [vmem:[%s2 + $0x4d0] sm:$0xff]
  %v8555 = vld [vmem:[%s2 + $0x4d8] sm:$0xff]
  %v8556 = vld [vmem:[%s2 + $0x4e0] sm:$0xff]
  %v8557 = vld [vmem:[%s2 + $0x4e8] sm:$0xff]
  %v8558 = vld [vmem:[%s2 + $0x4f0] sm:$0xff]
  %v8559 = vld [vmem:[%s2 + $0x4f8] sm:$0xff]
  %v8560 = vld [vmem:[%s2 + $0x500] sm:$0xff]
  %v8561 = vld [vmem:[%s2 + $0x508] sm:$0xff]
  %v8562 = vld [vmem:[%s2 + $0x510] sm:$0xff]
  %v8563 = vld [vmem:[%s2 + $0x518] sm:$0xff]
  %v8564 = vld [vmem:[%s2 + $0x520] sm:$0xff]
  %v8565 = vld [vmem:[%s2 + $0x528] sm:$0xff]
  %v8566 = vld [vmem:[%s2 + $0x530] sm:$0xff]
  %v8567 = vld [vmem:[%s2 + $0x538] sm:$0xff]
  %v8568 = vld [vmem:[%s2 + $0x540] sm:$0xff]
  %v8569 = vld [vmem:[%s2 + $0x548] sm:$0xff]
  %v8570 = vld [vmem:[%s2 + $0x550] sm:$0xff]
  %v8571 = vld [vmem:[%s2 + $0x558] sm:$0xff]
  %v8572 = vld [vmem:[%s2 + $0x560] sm:$0xff]
  %v8573 = vld [vmem:[%s2 + $0x568] sm:$0xff]
  %v8574 = vld [vmem:[%s2 + $0x570] sm:$0xff]
  %v8575 = vld [vmem:[%s2 + $0x578] sm:$0xff]
  %v8576 = vld [vmem:[%s2 + $0x580] sm:$0xff]
  %v8577 = vld [vmem:[%s2 + $0x588] sm:$0xff]
  %v8578 = vld [vmem:[%s2 + $0x590] sm:$0xff]
  %v8579 = vld [vmem:[%s2 + $0x598] sm:$0xff]
  %v8580 = vld [vmem:[%s2 + $0x5a0] sm:$0xff]
  %v8581 = vld [vmem:[%s2 + $0x5a8] sm:$0xff]
  %v8582 = vld [vmem:[%s2 + $0x5b0] sm:$0xff]
  %v8583 = vld [vmem:[%s2 + $0x5b8] sm:$0xff]
  %v8584 = vld [vmem:[%s2 + $0x5c0] sm:$0xff]
  %v8585 = vld [vmem:[%s2 + $0x5c8] sm:$0xff]
  %v8586 = vld [vmem:[%s2 + $0x5d0] sm:$0xff]
  %v8587 = vld [vmem:[%s2 + $0x5d8] sm:$0xff]
  %v8588 = vld [vmem:[%s2 + $0x5e0] sm:$0xff]
  %v8589 = vld [vmem:[%s2 + $0x5e8] sm:$0xff]
  %v8590 = vld [vmem:[%s2 + $0x5f0] sm:$0xff]
  %v8591 = vld [vmem:[%s2 + $0x5f8] sm:$0xff]
  %v8592 = vld [vmem:[%s2 + $0x600] sm:$0xff]
  %v8593 = vld [vmem:[%s2 + $0x608] sm:$0xff]
  %v8594 = vld [vmem:[%s2 + $0x610] sm:$0xff]
  %v8595 = vld [vmem:[%s2 + $0x618] sm:$0xff]
  %v8596 = vld [vmem:[%s2 + $0x620] sm:$0xff]
  %v8597 = vld [vmem:[%s2 + $0x628] sm:$0xff]
  %v8598 = vld [vmem:[%s2 + $0x630] sm:$0xff]
  %v8599 = vld [vmem:[%s2 + $0x638] sm:$0xff]
  %v8600 = vld [vmem:[%s2 + $0x640] sm:$0xff]
  %v8601 = vld [vmem:[%s2 + $0x648] sm:$0xff]
  %v8602 = vld [vmem:[%s2 + $0x650] sm:$0xff]
  %v8603 = vld [vmem:[%s2 + $0x658] sm:$0xff]
  %v8604 = vld [vmem:[%s2 + $0x660] sm:$0xff]
  %v8605 = vld [vmem:[%s2 + $0x668] sm:$0xff]
  %v8606 = vld [vmem:[%s2 + $0x670] sm:$0xff]
  %v8607 = vld [vmem:[%s2 + $0x678] sm:$0xff]
  %v8608 = vld [vmem:[%s2 + $0x680] sm:$0xff]
  %v8609 = vld [vmem:[%s2 + $0x688] sm:$0xff]
  %v8610 = vld [vmem:[%s2 + $0x690] sm:$0xff]
  %v8611 = vld [vmem:[%s2 + $0x698] sm:$0xff]
  %v8612 = vld [vmem:[%s2 + $0x6a0] sm:$0xff]
  %v8613 = vld [vmem:[%s2 + $0x6a8] sm:$0xff]
  %v8614 = vld [vmem:[%s2 + $0x6b0] sm:$0xff]
  %v8615 = vld [vmem:[%s2 + $0x6b8] sm:$0xff]
  %v8616 = vld [vmem:[%s2 + $0x6c0] sm:$0xff]
  %v8617 = vld [vmem:[%s2 + $0x6c8] sm:$0xff]
  %v8618 = vld [vmem:[%s2 + $0x6d0] sm:$0xff]
  %v8619 = vld [vmem:[%s2 + $0x6d8] sm:$0xff]
  %v8620 = vld [vmem:[%s2 + $0x6e0] sm:$0xff]
  %v8621 = vld [vmem:[%s2 + $0x6e8] sm:$0xff]
  %v8622 = vld [vmem:[%s2 + $0x6f0] sm:$0xff]
  %v8623 = vld [vmem:[%s2 + $0x6f8] sm:$0xff]
  %v8624 = vld [vmem:[%s2 + $0x700] sm:$0xff]
  %v8625 = vld [vmem:[%s2 + $0x708] sm:$0xff]
  %v8626 = vld [vmem:[%s2 + $0x710] sm:$0xff]
  %v8627 = vld [vmem:[%s2 + $0x718] sm:$0xff]
  %v8628 = vld [vmem:[%s2 + $0x720] sm:$0xff]
  %v8629 = vld [vmem:[%s2 + $0x728] sm:$0xff]
  %v8630 = vld [vmem:[%s2 + $0x730] sm:$0xff]
  %v8631 = vld [vmem:[%s2 + $0x738] sm:$0xff]
  %v8632 = vld [vmem:[%s2 + $0x740] sm:$0xff]
  %v8633 = vld [vmem:[%s2 + $0x748] sm:$0xff]
  %v8634 = vld [vmem:[%s2 + $0x750] sm:$0xff]
  %v8635 = vld [vmem:[%s2 + $0x758] sm:$0xff]
  %v8636 = vld [vmem:[%s2 + $0x760] sm:$0xff]
  %v8637 = vld [vmem:[%s2 + $0x768] sm:$0xff]
  %v8638 = vld [vmem:[%s2 + $0x770] sm:$0xff]
  %v8639 = vld [vmem:[%s2 + $0x778] sm:$0xff]
  %v8640 = vld [vmem:[%s2 + $0x780] sm:$0xff]
  %v8641 = vld [vmem:[%s2 + $0x788] sm:$0xff]
  %v8642 = vld [vmem:[%s2 + $0x790] sm:$0xff]
  %v8643 = vld [vmem:[%s2 + $0x798] sm:$0xff]
  %v8644 = vld [vmem:[%s2 + $0x7a0] sm:$0xff]
  %v8645 = vld [vmem:[%s2 + $0x7a8] sm:$0xff]
  %v8646 = vld [vmem:[%s2 + $0x7b0] sm:$0xff]
  %v8647 = vld [vmem:[%s2 + $0x7b8] sm:$0xff]
  %v8648 = vld [vmem:[%s2 + $0x7c0] sm:$0xff]
  %v8649 = vld [vmem:[%s2 + $0x7c8] sm:$0xff]
  %v8650 = vld [vmem:[%s2 + $0x7d0] sm:$0xff]
  %v8651 = vld [vmem:[%s2 + $0x7d8] sm:$0xff]
  %v8652 = vld [vmem:[%s2 + $0x7e0] sm:$0xff]
  %v8653 = vld [vmem:[%s2 + $0x7e8] sm:$0xff]
  %v8654 = vld [vmem:[%s2 + $0x7f0] sm:$0xff]
  %v8655 = vld [vmem:[%s2 + $0x7f8] sm:$0xff]
  %v8656 = vld [vmem:[%s2 + $0x800] sm:$0xff]
  %v8657 = vld [vmem:[%s2 + $0x808] sm:$0xff]
  %v8658 = vld [vmem:[%s2 + $0x810] sm:$0xff]
  %v8659 = vld [vmem:[%s2 + $0x818] sm:$0xff]
  %v8660 = vld [vmem:[%s2 + $0x820] sm:$0xff]
  %v8661 = vld [vmem:[%s2 + $0x828] sm:$0xff]
  %v8662 = vld [vmem:[%s2 + $0x830] sm:$0xff]
  %v8663 = vld [vmem:[%s2 + $0x838] sm:$0xff]
  %v8664 = vld [vmem:[%s2 + $0x840] sm:$0xff]
  %v8665 = vld [vmem:[%s2 + $0x848] sm:$0xff]
  %v8666 = vld [vmem:[%s2 + $0x850] sm:$0xff]
  %v8667 = vld [vmem:[%s2 + $0x858] sm:$0xff]
  %v8668 = vld [vmem:[%s2 + $0x860] sm:$0xff]
  %v8669 = vld [vmem:[%s2 + $0x868] sm:$0xff]
  %v8670 = vld [vmem:[%s2 + $0x870] sm:$0xff]
  %v8671 = vld [vmem:[%s2 + $0x878] sm:$0xff]
  %v8672 = vld [vmem:[%s2 + $0x880] sm:$0xff]
  %v8673 = vld [vmem:[%s2 + $0x888] sm:$0xff]
  %v8674 = vld [vmem:[%s2 + $0x890] sm:$0xff]
  %v8675 = vld [vmem:[%s2 + $0x898] sm:$0xff]
  %v8676 = vld [vmem:[%s2 + $0x8a0] sm:$0xff]
  %v8677 = vld [vmem:[%s2 + $0x8a8] sm:$0xff]
  %v8678 = vld [vmem:[%s2 + $0x8b0] sm:$0xff]
  %v8679 = vld [vmem:[%s2 + $0x8b8] sm:$0xff]
  %v8680 = vld [vmem:[%s2 + $0x8c0] sm:$0xff]
  %v8681 = vld [vmem:[%s2 + $0x8c8] sm:$0xff]
  %v8682 = vld [vmem:[%s2 + $0x8d0] sm:$0xff]
  %v8683 = vld [vmem:[%s2 + $0x8d8] sm:$0xff]
  %v8684 = vld [vmem:[%s2 + $0x8e0] sm:$0xff]
  %v8685 = vld [vmem:[%s2 + $0x8e8] sm:$0xff]
  %v8686 = vld [vmem:[%s2 + $0x8f0] sm:$0xff]
  %v8687 = vld [vmem:[%s2 + $0x8f8] sm:$0xff]
  %v8688 = vld [vmem:[%s2 + $0x900] sm:$0xff]
  %v8689 = vld [vmem:[%s2 + $0x908] sm:$0xff]
  %v8690 = vld [vmem:[%s2 + $0x910] sm:$0xff]
  %v8691 = vld [vmem:[%s2 + $0x918] sm:$0xff]
  %v8692 = vld [vmem:[%s2 + $0x920] sm:$0xff]
  %v8693 = vld [vmem:[%s2 + $0x928] sm:$0xff]
  %v8694 = vld [vmem:[%s2 + $0x930] sm:$0xff]
  %v8695 = vld [vmem:[%s2 + $0x938] sm:$0xff]
  %v8696 = vld [vmem:[%s2 + $0x940] sm:$0xff]
  %v8697 = vld [vmem:[%s2 + $0x948] sm:$0xff]
  %v8698 = vld [vmem:[%s2 + $0x950] sm:$0xff]
  %v8699 = vld [vmem:[%s2 + $0x958] sm:$0xff]
  %v8700 = vld [vmem:[%s2 + $0x960] sm:$0xff]
  %v8701 = vld [vmem:[%s2 + $0x968] sm:$0xff]
  %v8702 = vld [vmem:[%s2 + $0x970] sm:$0xff]
  %v8703 = vld [vmem:[%s2 + $0x978] sm:$0xff]
  %v8704 = vld [vmem:[%s2 + $0x980] sm:$0xff]
  %v8705 = vld [vmem:[%s2 + $0x988] sm:$0xff]
  %v8706 = vld [vmem:[%s2 + $0x990] sm:$0xff]
  %v8707 = vld [vmem:[%s2 + $0x998] sm:$0xff]
  %v8708 = vld [vmem:[%s2 + $0x9a0] sm:$0xff]
  %v8709 = vld [vmem:[%s2 + $0x9a8] sm:$0xff]
  %v8710 = vld [vmem:[%s2 + $0x9b0] sm:$0xff]
  %v8711 = vld [vmem:[%s2 + $0x9b8] sm:$0xff]
  %v8712 = vld [vmem:[%s2 + $0x9c0] sm:$0xff]
  %v8713 = vld [vmem:[%s2 + $0x9c8] sm:$0xff]
  %v8714 = vld [vmem:[%s2 + $0x9d0] sm:$0xff]
  %v8715 = vld [vmem:[%s2 + $0x9d8] sm:$0xff]
  %v8716 = vld [vmem:[%s2 + $0x9e0] sm:$0xff]
  %v8717 = vld [vmem:[%s2 + $0x9e8] sm:$0xff]
  %v8718 = vld [vmem:[%s2 + $0x9f0] sm:$0xff]
  %v8719 = vld [vmem:[%s2 + $0x9f8] sm:$0xff]
  %v8720 = vld [vmem:[%s2 + $0xa00] sm:$0xff]
  %v8721 = vld [vmem:[%s2 + $0xa08] sm:$0xff]
  %v8722 = vld [vmem:[%s2 + $0xa10] sm:$0xff]
  %v8723 = vld [vmem:[%s2 + $0xa18] sm:$0xff]
  %v8724 = vld [vmem:[%s2 + $0xa20] sm:$0xff]
  %v8725 = vld [vmem:[%s2 + $0xa28] sm:$0xff]
  %v8726 = vld [vmem:[%s2 + $0xa30] sm:$0xff]
  %v8727 = vld [vmem:[%s2 + $0xa38] sm:$0xff]
  %v8728 = vld [vmem:[%s2 + $0xa40] sm:$0xff]
  %v8729 = vld [vmem:[%s2 + $0xa48] sm:$0xff]
  %v8730 = vld [vmem:[%s2 + $0xa50] sm:$0xff]
  %v8731 = vld [vmem:[%s2 + $0xa58] sm:$0xff]
  %v8732 = vld [vmem:[%s2 + $0xa60] sm:$0xff]
  %v8733 = vld [vmem:[%s2 + $0xa68] sm:$0xff]
  %v8734 = vld [vmem:[%s2 + $0xa70] sm:$0xff]
  %v8735 = vld [vmem:[%s2 + $0xa78] sm:$0xff]
  %v8736 = vld [vmem:[%s2 + $0xa80] sm:$0xff]
  %v8737 = vld [vmem:[%s2 + $0xa88] sm:$0xff]
  %v8738 = vld [vmem:[%s2 + $0xa90] sm:$0xff]
  %v8739 = vld [vmem:[%s2 + $0xa98] sm:$0xff]
  %v8740 = vld [vmem:[%s2 + $0xaa0] sm:$0xff]
  %v8741 = vld [vmem:[%s2 + $0xaa8] sm:$0xff]
  %v8742 = vld [vmem:[%s2 + $0xab0] sm:$0xff]
  %v8743 = vld [vmem:[%s2 + $0xab8] sm:$0xff]
  %v8744 = vld [vmem:[%s2 + $0xac0] sm:$0xff]
  %v8745 = vld [vmem:[%s2 + $0xac8] sm:$0xff]
  %v8746 = vld [vmem:[%s2 + $0xad0] sm:$0xff]
  %v8747 = vld [vmem:[%s2 + $0xad8] sm:$0xff]
  %v8748 = vld [vmem:[%s2 + $0xae0] sm:$0xff]
  %v8749 = vld [vmem:[%s2 + $0xae8] sm:$0xff]
  %v8750 = vld [vmem:[%s2 + $0xaf0] sm:$0xff]
  %v8751 = vld [vmem:[%s2 + $0xaf8] sm:$0xff]
  %v8752 = vld [vmem:[%s2 + $0xb00] sm:$0xff]
  %v8753 = vld [vmem:[%s2 + $0xb08] sm:$0xff]
  %v8754 = vld [vmem:[%s2 + $0xb10] sm:$0xff]
  %v8755 = vld [vmem:[%s2 + $0xb18] sm:$0xff]
  %v8756 = vld [vmem:[%s2 + $0xb20] sm:$0xff]
  %v8757 = vld [vmem:[%s2 + $0xb28] sm:$0xff]
  %v8758 = vld [vmem:[%s2 + $0xb30] sm:$0xff]
  %v8759 = vld [vmem:[%s2 + $0xb38] sm:$0xff]
  %v8760 = vld [vmem:[%s2 + $0xb40] sm:$0xff]
  %v8761 = vld [vmem:[%s2 + $0xb48] sm:$0xff]
  %v8762 = vld [vmem:[%s2 + $0xb50] sm:$0xff]
  %v8763 = vld [vmem:[%s2 + $0xb58] sm:$0xff]
  %v8764 = vld [vmem:[%s2 + $0xb60] sm:$0xff]
  %v8765 = vld [vmem:[%s2 + $0xb68] sm:$0xff]
  %v8766 = vld [vmem:[%s2 + $0xb70] sm:$0xff]
  %v8767 = vld [vmem:[%s2 + $0xb78] sm:$0xff]
  %v8768 = vld [vmem:[%s2 + $0xb80] sm:$0xff]
  %v8769 = vld [vmem:[%s2 + $0xb88] sm:$0xff]
  %v8770 = vld [vmem:[%s2 + $0xb90] sm:$0xff]
  %v8771 = vld [vmem:[%s2 + $0xb98] sm:$0xff]
  %v8772 = vld [vmem:[%s2 + $0xba0] sm:$0xff]
  %v8773 = vld [vmem:[%s2 + $0xba8] sm:$0xff]
  %v8774 = vld [vmem:[%s2 + $0xbb0] sm:$0xff]
  %v8775 = vld [vmem:[%s2 + $0xbb8] sm:$0xff]
  %v8776 = vld [vmem:[%s2 + $0xbc0] sm:$0xff]
  %v8777 = vld [vmem:[%s2 + $0xbc8] sm:$0xff]
  %v8778 = vld [vmem:[%s2 + $0xbd0] sm:$0xff]
  %v8779 = vld [vmem:[%s2 + $0xbd8] sm:$0xff]
  %v8780 = vld [vmem:[%s2 + $0xbe0] sm:$0xff]
  %v8781 = vld [vmem:[%s2 + $0xbe8] sm:$0xff]
  %v8782 = vld [vmem:[%s2 + $0xbf0] sm:$0xff]
  %v8783 = vld [vmem:[%s2 + $0xbf8] sm:$0xff]
  %v8784 = vld [vmem:[%s2 + $0xc00] sm:$0xff]
  %v8785 = vld [vmem:[%s2 + $0xc08] sm:$0xff]
  %v8786 = vld [vmem:[%s2 + $0xc10] sm:$0xff]
  %v8787 = vld [vmem:[%s2 + $0xc18] sm:$0xff]
  %v8788 = vld [vmem:[%s2 + $0xc20] sm:$0xff]
  %v8789 = vld [vmem:[%s2 + $0xc28] sm:$0xff]
  %v8790 = vld [vmem:[%s2 + $0xc30] sm:$0xff]
  %v8791 = vld [vmem:[%s2 + $0xc38] sm:$0xff]
  %v8792 = vld [vmem:[%s2 + $0xc40] sm:$0xff]
  %v8793 = vld [vmem:[%s2 + $0xc48] sm:$0xff]
  %v8794 = vld [vmem:[%s2 + $0xc50] sm:$0xff]
  %v8795 = vld [vmem:[%s2 + $0xc58] sm:$0xff]
  %v8796 = vld [vmem:[%s2 + $0xc60] sm:$0xff]
  %v8797 = vld [vmem:[%s2 + $0xc68] sm:$0xff]
  %v8798 = vld [vmem:[%s2 + $0xc70] sm:$0xff]
  %v8799 = vld [vmem:[%s2 + $0xc78] sm:$0xff]
  %v8800 = vld [vmem:[%s2 + $0xc80] sm:$0xff]
  %v8801 = vld [vmem:[%s2 + $0xc88] sm:$0xff]
  %v8802 = vld [vmem:[%s2 + $0xc90] sm:$0xff]
  %v8803 = vld [vmem:[%s2 + $0xc98] sm:$0xff]
  %v8804 = vld [vmem:[%s2 + $0xca0] sm:$0xff]
  %v8805 = vld [vmem:[%s2 + $0xca8] sm:$0xff]
  %v8806 = vld [vmem:[%s2 + $0xcb0] sm:$0xff]
  %v8807 = vld [vmem:[%s2 + $0xcb8] sm:$0xff]
  %v8808 = vld [vmem:[%s2 + $0xcc0] sm:$0xff]
  %v8809 = vld [vmem:[%s2 + $0xcc8] sm:$0xff]
  %v8810 = vld [vmem:[%s2 + $0xcd0] sm:$0xff]
  %v8811 = vld [vmem:[%s2 + $0xcd8] sm:$0xff]
  %v8812 = vld [vmem:[%s2 + $0xce0] sm:$0xff]
  %v8813 = vld [vmem:[%s2 + $0xce8] sm:$0xff]
  %v8814 = vld [vmem:[%s2 + $0xcf0] sm:$0xff]
  %v8815 = vld [vmem:[%s2 + $0xcf8] sm:$0xff]
  %v8816 = vld [vmem:[%s2 + $0xd00] sm:$0xff]
  %v8817 = vld [vmem:[%s2 + $0xd08] sm:$0xff]
  %v8818 = vld [vmem:[%s2 + $0xd10] sm:$0xff]
  %v8819 = vld [vmem:[%s2 + $0xd18] sm:$0xff]
  %v8820 = vld [vmem:[%s2 + $0xd20] sm:$0xff]
  %v8821 = vld [vmem:[%s2 + $0xd28] sm:$0xff]
  %v8822 = vld [vmem:[%s2 + $0xd30] sm:$0xff]
  %v8823 = vld [vmem:[%s2 + $0xd38] sm:$0xff]
  %v8824 = vld [vmem:[%s2 + $0xd40] sm:$0xff]
  %v8825 = vld [vmem:[%s2 + $0xd48] sm:$0xff]
  %v8826 = vld [vmem:[%s2 + $0xd50] sm:$0xff]
  %v8827 = vld [vmem:[%s2 + $0xd58] sm:$0xff]
  %v8828 = vld [vmem:[%s2 + $0xd60] sm:$0xff]
  %v8829 = vld [vmem:[%s2 + $0xd68] sm:$0xff]
  %v8830 = vld [vmem:[%s2 + $0xd70] sm:$0xff]
  %v8831 = vld [vmem:[%s2 + $0xd78] sm:$0xff]
  %v8832 = vld [vmem:[%s2 + $0xd80] sm:$0xff]
  %v8833 = vld [vmem:[%s2 + $0xd88] sm:$0xff]
  %v8834 = vld [vmem:[%s2 + $0xd90] sm:$0xff]
  %v8835 = vld [vmem:[%s2 + $0xd98] sm:$0xff]
  %v8836 = vld [vmem:[%s2 + $0xda0] sm:$0xff]
  %v8837 = vld [vmem:[%s2 + $0xda8] sm:$0xff]
  %v8838 = vld [vmem:[%s2 + $0xdb0] sm:$0xff]
  %v8839 = vld [vmem:[%s2 + $0xdb8] sm:$0xff]
  %v8840 = vld [vmem:[%s2 + $0xdc0] sm:$0xff]
  %v8841 = vld [vmem:[%s2 + $0xdc8] sm:$0xff]
  %v8842 = vld [vmem:[%s2 + $0xdd0] sm:$0xff]
  %v8843 = vld [vmem:[%s2 + $0xdd8] sm:$0xff]
  %v8844 = vld [vmem:[%s2 + $0xde0] sm:$0xff]
  %v8845 = vld [vmem:[%s2 + $0xde8] sm:$0xff]
  %v8846 = vld [vmem:[%s2 + $0xdf0] sm:$0xff]
  %v8847 = vld [vmem:[%s2 + $0xdf8] sm:$0xff]
  %v8848 = vld [vmem:[%s2 + $0xe00] sm:$0xff]
  %v8849 = vld [vmem:[%s2 + $0xe08] sm:$0xff]
  %v8850 = vld [vmem:[%s2 + $0xe10] sm:$0xff]
  %v8851 = vld [vmem:[%s2 + $0xe18] sm:$0xff]
  %v8852 = vld [vmem:[%s2 + $0xe20] sm:$0xff]
  %v8853 = vld [vmem:[%s2 + $0xe28] sm:$0xff]
  %v8854 = vld [vmem:[%s2 + $0xe30] sm:$0xff]
  %v8855 = vld [vmem:[%s2 + $0xe38] sm:$0xff]
  %v8856 = vld [vmem:[%s2 + $0xe40] sm:$0xff]
  %v8857 = vld [vmem:[%s2 + $0xe48] sm:$0xff]
  %v8858 = vld [vmem:[%s2 + $0xe50] sm:$0xff]
  %v8859 = vld [vmem:[%s2 + $0xe58] sm:$0xff]
  %v8860 = vld [vmem:[%s2 + $0xe60] sm:$0xff]
  %v8861 = vld [vmem:[%s2 + $0xe68] sm:$0xff]
  %v8862 = vld [vmem:[%s2 + $0xe70] sm:$0xff]
  %v8863 = vld [vmem:[%s2 + $0xe78] sm:$0xff]
  %v8864 = vld [vmem:[%s2 + $0xe80] sm:$0xff]
  %v8865 = vld [vmem:[%s2 + $0xe88] sm:$0xff]
  %v8866 = vld [vmem:[%s2 + $0xe90] sm:$0xff]
  %v8867 = vld [vmem:[%s2 + $0xe98] sm:$0xff]
  %v8868 = vld [vmem:[%s2 + $0xea0] sm:$0xff]
  %v8869 = vld [vmem:[%s2 + $0xea8] sm:$0xff]
  %v8870 = vld [vmem:[%s2 + $0xeb0] sm:$0xff]
  %v8871 = vld [vmem:[%s2 + $0xeb8] sm:$0xff]
  %v8872 = vld [vmem:[%s2 + $0xec0] sm:$0xff]
  %v8873 = vld [vmem:[%s2 + $0xec8] sm:$0xff]
  %v8874 = vld [vmem:[%s2 + $0xed0] sm:$0xff]
  %v8875 = vld [vmem:[%s2 + $0xed8] sm:$0xff]
  %v8876 = vld [vmem:[%s2 + $0xee0] sm:$0xff]
  %v8877 = vld [vmem:[%s2 + $0xee8] sm:$0xff]
  %v8878 = vld [vmem:[%s2 + $0xef0] sm:$0xff]
  %v8879 = vld [vmem:[%s2 + $0xef8] sm:$0xff]
  %v8880 = vld [vmem:[%s2 + $0xf00] sm:$0xff]
  %v8881 = vld [vmem:[%s2 + $0xf08] sm:$0xff]
  %v8882 = vld [vmem:[%s2 + $0xf10] sm:$0xff]
  %v8883 = vld [vmem:[%s2 + $0xf18] sm:$0xff]
  %v8884 = vld [vmem:[%s2 + $0xf20] sm:$0xff]
  %v8885 = vld [vmem:[%s2 + $0xf28] sm:$0xff]
  %v8886 = vld [vmem:[%s2 + $0xf30] sm:$0xff]
  %v8887 = vld [vmem:[%s2 + $0xf38] sm:$0xff]
  %v8888 = vld [vmem:[%s2 + $0xf40] sm:$0xff]
  %v8889 = vld [vmem:[%s2 + $0xf48] sm:$0xff]
  %v8890 = vld [vmem:[%s2 + $0xf50] sm:$0xff]
  %v8891 = vld [vmem:[%s2 + $0xf58] sm:$0xff]
  %v8892 = vld [vmem:[%s2 + $0xf60] sm:$0xff]
  %v8893 = vld [vmem:[%s2 + $0xf68] sm:$0xff]
  %v8894 = vld [vmem:[%s2 + $0xf70] sm:$0xff]
  %v8895 = vld [vmem:[%s2 + $0xf78] sm:$0xff]
  %v8896 = vld [vmem:[%s2 + $0xf80] sm:$0xff]
  %v8897 = vld [vmem:[%s2 + $0xf88] sm:$0xff]
  %v8898 = vld [vmem:[%s2 + $0xf90] sm:$0xff]
  %v8899 = vld [vmem:[%s2 + $0xf98] sm:$0xff]
  %v8900 = vld [vmem:[%s2 + $0xfa0] sm:$0xff]
  %v8901 = vld [vmem:[%s2 + $0xfa8] sm:$0xff]
  %v8902 = vld [vmem:[%s2 + $0xfb0] sm:$0xff]
  %v8903 = vld [vmem:[%s2 + $0xfb8] sm:$0xff]
  %v8904 = vld [vmem:[%s2 + $0xfc0] sm:$0xff]
  %v8905 = vld [vmem:[%s2 + $0xfc8] sm:$0xff]
  %v8906 = vld [vmem:[%s2 + $0xfd0] sm:$0xff]
  %v8907 = vld [vmem:[%s2 + $0xfd8] sm:$0xff]
  %v8908 = vld [vmem:[%s2 + $0xfe0] sm:$0xff]
  %v8909 = vld [vmem:[%s2 + $0xfe8] sm:$0xff]
  %v8910 = vld [vmem:[%s2 + $0xff0] sm:$0xff]
  %v8911 = vld [vmem:[%s2 + $0xff8] sm:$0xff]
  %8912 = vmatpush.msra.mxu0 %v8520
  %8913 = vmatpush.msra.mxu0 %v8512
  %8914 = vmatpush.msra.mxu0 %v8504
  %8915 = vmatpush.msra.mxu0 %v8496
  %8916 = vmatpush.msra.mxu0 %v8488
  %8917 = vmatpush.msra.mxu0 %v8480
  %8918 = vmatpush.msra.mxu0 %v8472
  %8919 = vmatpush.msra.mxu0 %v8464
  %8920 = vmatpush.msra.mxu0 %v8456
  %8921 = vmatpush.msra.mxu0 %v8448
  %8922 = vmatpush.msra.mxu0 %v8440
  %8923 = vmatpush.msra.mxu0 %v8432
  %8924 = vmatpush.msra.mxu0 %v8424
  %8925 = vmatpush.msra.mxu0 %v8416
  %8926 = vmatpush.msra.mxu0 %v8408
  %8927 = vmatpush.msra.mxu0 %v8400
  %8928 = vmatmul.f32.gmra.mxu0 %v8387
  %v8929 = vpop.f32.mrf.mxu0
  %v8930 = vadd.f32 0.0, %v8929
  %8931 = vdwg.mxu0
  %8932 = vmatpush.msra.mxu0 %v8648
  %8933 = vmatpush.msra.mxu0 %v8640
  %8934 = vmatpush.msra.mxu0 %v8632
  %8935 = vmatpush.msra.mxu0 %v8624
  %8936 = vmatpush.msra.mxu0 %v8616
  %8937 = vmatpush.msra.mxu0 %v8608
  %8938 = vmatpush.msra.mxu0 %v8600
  %8939 = vmatpush.msra.mxu0 %v8592
  %8940 = vmatpush.msra.mxu0 %v8584
  %8941 = vmatpush.msra.mxu0 %v8576
  %8942 = vmatpush.msra.mxu0 %v8568
  %8943 = vmatpush.msra.mxu0 %v8560
  %8944 = vmatpush.msra.mxu0 %v8552
  %8945 = vmatpush.msra.mxu0 %v8544
  %8946 = vmatpush.msra.mxu0 %v8536
  %8947 = vmatpush.msra.mxu0 %v8528
  %8948 = vmatmul.f32.gmra.mxu0 %v8388
  %v8949 = vpop.f32.mrf.mxu0
  %v8950 = vadd.f32 %v8930, %v8949
  %8951 = vdwg.mxu0
  %8952 = vmatpush.msra.mxu0 %v8776
  %8953 = vmatpush.msra.mxu0 %v8768
  %8954 = vmatpush.msra.mxu0 %v8760
  %8955 = vmatpush.msra.mxu0 %v8752
  %8956 = vmatpush.msra.mxu0 %v8744
  %8957 = vmatpush.msra.mxu0 %v8736
  %8958 = vmatpush.msra.mxu0 %v8728
  %8959 = vmatpush.msra.mxu0 %v8720
  %8960 = vmatpush.msra.mxu0 %v8712
  %8961 = vmatpush.msra.mxu0 %v8704
  %8962 = vmatpush.msra.mxu0 %v8696
  %8963 = vmatpush.msra.mxu0 %v8688
  %8964 = vmatpush.msra.mxu0 %v8680
  %8965 = vmatpush.msra.mxu0 %v8672
  %8966 = vmatpush.msra.mxu0 %v8664
  %8967 = vmatpush.msra.mxu0 %v8656
  %8968 = vmatmul.f32.gmra.mxu0 %v8389
  %v8969 = vpop.f32.mrf.mxu0
  %v8970 = vadd.f32 %v8950, %v8969
  %8971 = vdwg.mxu0
  %8972 = vmatpush.msra.mxu0 %v8904
  %8973 = vmatpush.msra.mxu0 %v8896
  %8974 = vmatpush.msra.mxu0 %v8888
  %8975 = vmatpush.msra.mxu0 %v8880
  %8976 = vmatpush.msra.mxu0 %v8872
  %8977 = vmatpush.msra.mxu0 %v8864
  %8978 = vmatpush.msra.mxu0 %v8856
  %8979 = vmatpush.msra.mxu0 %v8848
  %8980 = vmatpush.msra.mxu0 %v8840
  %8981 = vmatpush.msra.mxu0 %v8832
  %8982 = vmatpush.msra.mxu0 %v8824
  %8983 = vmatpush.msra.mxu0 %v8816
  %8984 = vmatpush.msra.mxu0 %v8808
  %8985 = vmatpush.msra.mxu0 %v8800
  %8986 = vmatpush.msra.mxu0 %v8792
  %8987 = vmatpush.msra.mxu0 %v8784
  %8988 = vmatmul.f32.gmra.mxu0 %v8390
  %v8989 = vpop.f32.mrf.mxu0
  %v8990 = vadd.f32 %v8970, %v8989
  %8991 = vdwg.mxu0
  %8992 = vmatpush.msra.mxu0 %v8521
  %8993 = vmatpush.msra.mxu0 %v8513
  %8994 = vmatpush.msra.mxu0 %v8505
  %8995 = vmatpush.msra.mxu0 %v8497
  %8996 = vmatpush.msra.mxu0 %v8489
  %8997 = vmatpush.msra.mxu0 %v8481
  %8998 = vmatpush.msra.mxu0 %v8473
  %8999 = vmatpush.msra.mxu0 %v8465
  %9000 = vmatpush.msra.mxu0 %v8457
  %9001 = vmatpush.msra.mxu0 %v8449
  %9002 = vmatpush.msra.mxu0 %v8441
  %9003 = vmatpush.msra.mxu0 %v8433
  %9004 = vmatpush.msra.mxu0 %v8425
  %9005 = vmatpush.msra.mxu0 %v8417
  %9006 = vmatpush.msra.mxu0 %v8409
  %9007 = vmatpush.msra.mxu0 %v8401
  %9008 = vmatmul.f32.gmra.mxu0 %v8387
  %v9009 = vpop.f32.mrf.mxu0
  %v9010 = vadd.f32 0.0, %v9009
  %9011 = vdwg.mxu0
  %9012 = vmatpush.msra.mxu0 %v8649
  %9013 = vmatpush.msra.mxu0 %v8641
  %9014 = vmatpush.msra.mxu0 %v8633
  %9015 = vmatpush.msra.mxu0 %v8625
  %9016 = vmatpush.msra.mxu0 %v8617
  %9017 = vmatpush.msra.mxu0 %v8609
  %9018 = vmatpush.msra.mxu0 %v8601
  %9019 = vmatpush.msra.mxu0 %v8593
  %9020 = vmatpush.msra.mxu0 %v8585
  %9021 = vmatpush.msra.mxu0 %v8577
  %9022 = vmatpush.msra.mxu0 %v8569
  %9023 = vmatpush.msra.mxu0 %v8561
  %9024 = vmatpush.msra.mxu0 %v8553
  %9025 = vmatpush.msra.mxu0 %v8545
  %9026 = vmatpush.msra.mxu0 %v8537
  %9027 = vmatpush.msra.mxu0 %v8529
  %9028 = vmatmul.f32.gmra.mxu0 %v8388
  %v9029 = vpop.f32.mrf.mxu0
  %v9030 = vadd.f32 %v9010, %v9029
  %9031 = vdwg.mxu0
  %9032 = vmatpush.msra.mxu0 %v8777
  %9033 = vmatpush.msra.mxu0 %v8769
  %9034 = vmatpush.msra.mxu0 %v8761
  %9035 = vmatpush.msra.mxu0 %v8753
  %9036 = vmatpush.msra.mxu0 %v8745
  %9037 = vmatpush.msra.mxu0 %v8737
  %9038 = vmatpush.msra.mxu0 %v8729
  %9039 = vmatpush.msra.mxu0 %v8721
  %9040 = vmatpush.msra.mxu0 %v8713
  %9041 = vmatpush.msra.mxu0 %v8705
  %9042 = vmatpush.msra.mxu0 %v8697
  %9043 = vmatpush.msra.mxu0 %v8689
  %9044 = vmatpush.msra.mxu0 %v8681
  %9045 = vmatpush.msra.mxu0 %v8673
  %9046 = vmatpush.msra.mxu0 %v8665
  %9047 = vmatpush.msra.mxu0 %v8657
  %9048 = vmatmul.f32.gmra.mxu0 %v8389
  %v9049 = vpop.f32.mrf.mxu0
  %v9050 = vadd.f32 %v9030, %v9049
  %9051 = vdwg.mxu0
  %9052 = vmatpush.msra.mxu0 %v8905
  %9053 = vmatpush.msra.mxu0 %v8897
  %9054 = vmatpush.msra.mxu0 %v8889
  %9055 = vmatpush.msra.mxu0 %v8881
  %9056 = vmatpush.msra.mxu0 %v8873
  %9057 = vmatpush.msra.mxu0 %v8865
  %9058 = vmatpush.msra.mxu0 %v8857
  %9059 = vmatpush.msra.mxu0 %v8849
  %9060 = vmatpush.msra.mxu0 %v8841
  %9061 = vmatpush.msra.mxu0 %v8833
  %9062 = vmatpush.msra.mxu0 %v8825
  %9063 = vmatpush.msra.mxu0 %v8817
  %9064 = vmatpush.msra.mxu0 %v8809
  %9065 = vmatpush.msra.mxu0 %v8801
  %9066 = vmatpush.msra.mxu0 %v8793
  %9067 = vmatpush.msra.mxu0 %v8785
  %9068 = vmatmul.f32.gmra.mxu0 %v8390
  %v9069 = vpop.f32.mrf.mxu0
  %v9070 = vadd.f32 %v9050, %v9069
  %9071 = vdwg.mxu0
  %9072 = vmatpush.msra.mxu0 %v8522
  %9073 = vmatpush.msra.mxu0 %v8514
  %9074 = vmatpush.msra.mxu0 %v8506
  %9075 = vmatpush.msra.mxu0 %v8498
  %9076 = vmatpush.msra.mxu0 %v8490
  %9077 = vmatpush.msra.mxu0 %v8482
  %9078 = vmatpush.msra.mxu0 %v8474
  %9079 = vmatpush.msra.mxu0 %v8466
  %9080 = vmatpush.msra.mxu0 %v8458
  %9081 = vmatpush.msra.mxu0 %v8450
  %9082 = vmatpush.msra.mxu0 %v8442
  %9083 = vmatpush.msra.mxu0 %v8434
  %9084 = vmatpush.msra.mxu0 %v8426
  %9085 = vmatpush.msra.mxu0 %v8418
  %9086 = vmatpush.msra.mxu0 %v8410
  %9087 = vmatpush.msra.mxu0 %v8402
  %9088 = vmatmul.f32.gmra.mxu0 %v8387
  %v9089 = vpop.f32.mrf.mxu0
  %v9090 = vadd.f32 0.0, %v9089
  %9091 = vdwg.mxu0
  %9092 = vmatpush.msra.mxu0 %v8650
  %9093 = vmatpush.msra.mxu0 %v8642
  %9094 = vmatpush.msra.mxu0 %v8634
  %9095 = vmatpush.msra.mxu0 %v8626
  %9096 = vmatpush.msra.mxu0 %v8618
  %9097 = vmatpush.msra.mxu0 %v8610
  %9098 = vmatpush.msra.mxu0 %v8602
  %9099 = vmatpush.msra.mxu0 %v8594
  %9100 = vmatpush.msra.mxu0 %v8586
  %9101 = vmatpush.msra.mxu0 %v8578
  %9102 = vmatpush.msra.mxu0 %v8570
  %9103 = vmatpush.msra.mxu0 %v8562
  %9104 = vmatpush.msra.mxu0 %v8554
  %9105 = vmatpush.msra.mxu0 %v8546
  %9106 = vmatpush.msra.mxu0 %v8538
  %9107 = vmatpush.msra.mxu0 %v8530
  %9108 = vmatmul.f32.gmra.mxu0 %v8388
  %v9109 = vpop.f32.mrf.mxu0
  %v9110 = vadd.f32 %v9090, %v9109
  %9111 = vdwg.mxu0
  %9112 = vmatpush.msra.mxu0 %v8778
  %9113 = vmatpush.msra.mxu0 %v8770
  %9114 = vmatpush.msra.mxu0 %v8762
  %9115 = vmatpush.msra.mxu0 %v8754
  %9116 = vmatpush.msra.mxu0 %v8746
  %9117 = vmatpush.msra.mxu0 %v8738
  %9118 = vmatpush.msra.mxu0 %v8730
  %9119 = vmatpush.msra.mxu0 %v8722
  %9120 = vmatpush.msra.mxu0 %v8714
  %9121 = vmatpush.msra.mxu0 %v8706
  %9122 = vmatpush.msra.mxu0 %v8698
  %9123 = vmatpush.msra.mxu0 %v8690
  %9124 = vmatpush.msra.mxu0 %v8682
  %9125 = vmatpush.msra.mxu0 %v8674
  %9126 = vmatpush.msra.mxu0 %v8666
  %9127 = vmatpush.msra.mxu0 %v8658
  %9128 = vmatmul.f32.gmra.mxu0 %v8389
  %v9129 = vpop.f32.mrf.mxu0
  %v9130 = vadd.f32 %v9110, %v9129
  %9131 = vdwg.mxu0
  %9132 = vmatpush.msra.mxu0 %v8906
  %9133 = vmatpush.msra.mxu0 %v8898
  %9134 = vmatpush.msra.mxu0 %v8890
  %9135 = vmatpush.msra.mxu0 %v8882
  %9136 = vmatpush.msra.mxu0 %v8874
  %9137 = vmatpush.msra.mxu0 %v8866
  %9138 = vmatpush.msra.mxu0 %v8858
  %9139 = vmatpush.msra.mxu0 %v8850
  %9140 = vmatpush.msra.mxu0 %v8842
  %9141 = vmatpush.msra.mxu0 %v8834
  %9142 = vmatpush.msra.mxu0 %v8826
  %9143 = vmatpush.msra.mxu0 %v8818
  %9144 = vmatpush.msra.mxu0 %v8810
  %9145 = vmatpush.msra.mxu0 %v8802
  %9146 = vmatpush.msra.mxu0 %v8794
  %9147 = vmatpush.msra.mxu0 %v8786
  %9148 = vmatmul.f32.gmra.mxu0 %v8390
  %v9149 = vpop.f32.mrf.mxu0
  %v9150 = vadd.f32 %v9130, %v9149
  %9151 = vdwg.mxu0
  %9152 = vmatpush.msra.mxu0 %v8523
  %9153 = vmatpush.msra.mxu0 %v8515
  %9154 = vmatpush.msra.mxu0 %v8507
  %9155 = vmatpush.msra.mxu0 %v8499
  %9156 = vmatpush.msra.mxu0 %v8491
  %9157 = vmatpush.msra.mxu0 %v8483
  %9158 = vmatpush.msra.mxu0 %v8475
  %9159 = vmatpush.msra.mxu0 %v8467
  %9160 = vmatpush.msra.mxu0 %v8459
  %9161 = vmatpush.msra.mxu0 %v8451
  %9162 = vmatpush.msra.mxu0 %v8443
  %9163 = vmatpush.msra.mxu0 %v8435
  %9164 = vmatpush.msra.mxu0 %v8427
  %9165 = vmatpush.msra.mxu0 %v8419
  %9166 = vmatpush.msra.mxu0 %v8411
  %9167 = vmatpush.msra.mxu0 %v8403
  %9168 = vmatmul.f32.gmra.mxu0 %v8387
  %v9169 = vpop.f32.mrf.mxu0
  %v9170 = vadd.f32 0.0, %v9169
  %9171 = vdwg.mxu0
  %9172 = vmatpush.msra.mxu0 %v8651
  %9173 = vmatpush.msra.mxu0 %v8643
  %9174 = vmatpush.msra.mxu0 %v8635
  %9175 = vmatpush.msra.mxu0 %v8627
  %9176 = vmatpush.msra.mxu0 %v8619
  %9177 = vmatpush.msra.mxu0 %v8611
  %9178 = vmatpush.msra.mxu0 %v8603
  %9179 = vmatpush.msra.mxu0 %v8595
  %9180 = vmatpush.msra.mxu0 %v8587
  %9181 = vmatpush.msra.mxu0 %v8579
  %9182 = vmatpush.msra.mxu0 %v8571
  %9183 = vmatpush.msra.mxu0 %v8563
  %9184 = vmatpush.msra.mxu0 %v8555
  %9185 = vmatpush.msra.mxu0 %v8547
  %9186 = vmatpush.msra.mxu0 %v8539
  %9187 = vmatpush.msra.mxu0 %v8531
  %9188 = vmatmul.f32.gmra.mxu0 %v8388
  %v9189 = vpop.f32.mrf.mxu0
  %v9190 = vadd.f32 %v9170, %v9189
  %9191 = vdwg.mxu0
  %9192 = vmatpush.msra.mxu0 %v8779
  %9193 = vmatpush.msra.mxu0 %v8771
  %9194 = vmatpush.msra.mxu0 %v8763
  %9195 = vmatpush.msra.mxu0 %v8755
  %9196 = vmatpush.msra.mxu0 %v8747
  %9197 = vmatpush.msra.mxu0 %v8739
  %9198 = vmatpush.msra.mxu0 %v8731
  %9199 = vmatpush.msra.mxu0 %v8723
  %9200 = vmatpush.msra.mxu0 %v8715
  %9201 = vmatpush.msra.mxu0 %v8707
  %9202 = vmatpush.msra.mxu0 %v8699
  %9203 = vmatpush.msra.mxu0 %v8691
  %9204 = vmatpush.msra.mxu0 %v8683
  %9205 = vmatpush.msra.mxu0 %v8675
  %9206 = vmatpush.msra.mxu0 %v8667
  %9207 = vmatpush.msra.mxu0 %v8659
  %9208 = vmatmul.f32.gmra.mxu0 %v8389
  %v9209 = vpop.f32.mrf.mxu0
  %v9210 = vadd.f32 %v9190, %v9209
  %9211 = vdwg.mxu0
  %9212 = vmatpush.msra.mxu0 %v8907
  %9213 = vmatpush.msra.mxu0 %v8899
  %9214 = vmatpush.msra.mxu0 %v8891
  %9215 = vmatpush.msra.mxu0 %v8883
  %9216 = vmatpush.msra.mxu0 %v8875
  %9217 = vmatpush.msra.mxu0 %v8867
  %9218 = vmatpush.msra.mxu0 %v8859
  %9219 = vmatpush.msra.mxu0 %v8851
  %9220 = vmatpush.msra.mxu0 %v8843
  %9221 = vmatpush.msra.mxu0 %v8835
  %9222 = vmatpush.msra.mxu0 %v8827
  %9223 = vmatpush.msra.mxu0 %v8819
  %9224 = vmatpush.msra.mxu0 %v8811
  %9225 = vmatpush.msra.mxu0 %v8803
  %9226 = vmatpush.msra.mxu0 %v8795
  %9227 = vmatpush.msra.mxu0 %v8787
  %9228 = vmatmul.f32.gmra.mxu0 %v8390
  %v9229 = vpop.f32.mrf.mxu0
  %v9230 = vadd.f32 %v9210, %v9229
  %9231 = vdwg.mxu0
  %9232 = vmatpush.msra.mxu0 %v8524
  %9233 = vmatpush.msra.mxu0 %v8516
  %9234 = vmatpush.msra.mxu0 %v8508
  %9235 = vmatpush.msra.mxu0 %v8500
  %9236 = vmatpush.msra.mxu0 %v8492
  %9237 = vmatpush.msra.mxu0 %v8484
  %9238 = vmatpush.msra.mxu0 %v8476
  %9239 = vmatpush.msra.mxu0 %v8468
  %9240 = vmatpush.msra.mxu0 %v8460
  %9241 = vmatpush.msra.mxu0 %v8452
  %9242 = vmatpush.msra.mxu0 %v8444
  %9243 = vmatpush.msra.mxu0 %v8436
  %9244 = vmatpush.msra.mxu0 %v8428
  %9245 = vmatpush.msra.mxu0 %v8420
  %9246 = vmatpush.msra.mxu0 %v8412
  %9247 = vmatpush.msra.mxu0 %v8404
  %9248 = vmatmul.f32.gmra.mxu0 %v8387
  %v9249 = vpop.f32.mrf.mxu0
  %v9250 = vadd.f32 0.0, %v9249
  %9251 = vdwg.mxu0
  %9252 = vmatpush.msra.mxu0 %v8652
  %9253 = vmatpush.msra.mxu0 %v8644
  %9254 = vmatpush.msra.mxu0 %v8636
  %9255 = vmatpush.msra.mxu0 %v8628
  %9256 = vmatpush.msra.mxu0 %v8620
  %9257 = vmatpush.msra.mxu0 %v8612
  %9258 = vmatpush.msra.mxu0 %v8604
  %9259 = vmatpush.msra.mxu0 %v8596
  %9260 = vmatpush.msra.mxu0 %v8588
  %9261 = vmatpush.msra.mxu0 %v8580
  %9262 = vmatpush.msra.mxu0 %v8572
  %9263 = vmatpush.msra.mxu0 %v8564
  %9264 = vmatpush.msra.mxu0 %v8556
  %9265 = vmatpush.msra.mxu0 %v8548
  %9266 = vmatpush.msra.mxu0 %v8540
  %9267 = vmatpush.msra.mxu0 %v8532
  %9268 = vmatmul.f32.gmra.mxu0 %v8388
  %v9269 = vpop.f32.mrf.mxu0
  %v9270 = vadd.f32 %v9250, %v9269
  %9271 = vdwg.mxu0
  %9272 = vmatpush.msra.mxu0 %v8780
  %9273 = vmatpush.msra.mxu0 %v8772
  %9274 = vmatpush.msra.mxu0 %v8764
  %9275 = vmatpush.msra.mxu0 %v8756
  %9276 = vmatpush.msra.mxu0 %v8748
  %9277 = vmatpush.msra.mxu0 %v8740
  %9278 = vmatpush.msra.mxu0 %v8732
  %9279 = vmatpush.msra.mxu0 %v8724
  %9280 = vmatpush.msra.mxu0 %v8716
  %9281 = vmatpush.msra.mxu0 %v8708
  %9282 = vmatpush.msra.mxu0 %v8700
  %9283 = vmatpush.msra.mxu0 %v8692
  %9284 = vmatpush.msra.mxu0 %v8684
  %9285 = vmatpush.msra.mxu0 %v8676
  %9286 = vmatpush.msra.mxu0 %v8668
  %9287 = vmatpush.msra.mxu0 %v8660
  %9288 = vmatmul.f32.gmra.mxu0 %v8389
  %v9289 = vpop.f32.mrf.mxu0
  %v9290 = vadd.f32 %v9270, %v9289
  %9291 = vdwg.mxu0
  %9292 = vmatpush.msra.mxu0 %v8908
  %9293 = vmatpush.msra.mxu0 %v8900
  %9294 = vmatpush.msra.mxu0 %v8892
  %9295 = vmatpush.msra.mxu0 %v8884
  %9296 = vmatpush.msra.mxu0 %v8876
  %9297 = vmatpush.msra.mxu0 %v8868
  %9298 = vmatpush.msra.mxu0 %v8860
  %9299 = vmatpush.msra.mxu0 %v8852
  %9300 = vmatpush.msra.mxu0 %v8844
  %9301 = vmatpush.msra.mxu0 %v8836
  %9302 = vmatpush.msra.mxu0 %v8828
  %9303 = vmatpush.msra.mxu0 %v8820
  %9304 = vmatpush.msra.mxu0 %v8812
  %9305 = vmatpush.msra.mxu0 %v8804
  %9306 = vmatpush.msra.mxu0 %v8796
  %9307 = vmatpush.msra.mxu0 %v8788
  %9308 = vmatmul.f32.gmra.mxu0 %v8390
  %v9309 = vpop.f32.mrf.mxu0
  %v9310 = vadd.f32 %v9290, %v9309
  %9311 = vdwg.mxu0
  %9312 = vmatpush.msra.mxu0 %v8525
  %9313 = vmatpush.msra.mxu0 %v8517
  %9314 = vmatpush.msra.mxu0 %v8509
  %9315 = vmatpush.msra.mxu0 %v8501
  %9316 = vmatpush.msra.mxu0 %v8493
  %9317 = vmatpush.msra.mxu0 %v8485
  %9318 = vmatpush.msra.mxu0 %v8477
  %9319 = vmatpush.msra.mxu0 %v8469
  %9320 = vmatpush.msra.mxu0 %v8461
  %9321 = vmatpush.msra.mxu0 %v8453
  %9322 = vmatpush.msra.mxu0 %v8445
  %9323 = vmatpush.msra.mxu0 %v8437
  %9324 = vmatpush.msra.mxu0 %v8429
  %9325 = vmatpush.msra.mxu0 %v8421
  %9326 = vmatpush.msra.mxu0 %v8413
  %9327 = vmatpush.msra.mxu0 %v8405
  %9328 = vmatmul.f32.gmra.mxu0 %v8387
  %v9329 = vpop.f32.mrf.mxu0
  %v9330 = vadd.f32 0.0, %v9329
  %9331 = vdwg.mxu0
  %9332 = vmatpush.msra.mxu0 %v8653
  %9333 = vmatpush.msra.mxu0 %v8645
  %9334 = vmatpush.msra.mxu0 %v8637
  %9335 = vmatpush.msra.mxu0 %v8629
  %9336 = vmatpush.msra.mxu0 %v8621
  %9337 = vmatpush.msra.mxu0 %v8613
  %9338 = vmatpush.msra.mxu0 %v8605
  %9339 = vmatpush.msra.mxu0 %v8597
  %9340 = vmatpush.msra.mxu0 %v8589
  %9341 = vmatpush.msra.mxu0 %v8581
  %9342 = vmatpush.msra.mxu0 %v8573
  %9343 = vmatpush.msra.mxu0 %v8565
  %9344 = vmatpush.msra.mxu0 %v8557
  %9345 = vmatpush.msra.mxu0 %v8549
  %9346 = vmatpush.msra.mxu0 %v8541
  %9347 = vmatpush.msra.mxu0 %v8533
  %9348 = vmatmul.f32.gmra.mxu0 %v8388
  %v9349 = vpop.f32.mrf.mxu0
  %v9350 = vadd.f32 %v9330, %v9349
  %9351 = vdwg.mxu0
  %9352 = vmatpush.msra.mxu0 %v8781
  %9353 = vmatpush.msra.mxu0 %v8773
  %9354 = vmatpush.msra.mxu0 %v8765
  %9355 = vmatpush.msra.mxu0 %v8757
  %9356 = vmatpush.msra.mxu0 %v8749
  %9357 = vmatpush.msra.mxu0 %v8741
  %9358 = vmatpush.msra.mxu0 %v8733
  %9359 = vmatpush.msra.mxu0 %v8725
  %9360 = vmatpush.msra.mxu0 %v8717
  %9361 = vmatpush.msra.mxu0 %v8709
  %9362 = vmatpush.msra.mxu0 %v8701
  %9363 = vmatpush.msra.mxu0 %v8693
  %9364 = vmatpush.msra.mxu0 %v8685
  %9365 = vmatpush.msra.mxu0 %v8677
  %9366 = vmatpush.msra.mxu0 %v8669
  %9367 = vmatpush.msra.mxu0 %v8661
  %9368 = vmatmul.f32.gmra.mxu0 %v8389
  %v9369 = vpop.f32.mrf.mxu0
  %v9370 = vadd.f32 %v9350, %v9369
  %9371 = vdwg.mxu0
  %9372 = vmatpush.msra.mxu0 %v8909
  %9373 = vmatpush.msra.mxu0 %v8901
  %9374 = vmatpush.msra.mxu0 %v8893
  %9375 = vmatpush.msra.mxu0 %v8885
  %9376 = vmatpush.msra.mxu0 %v8877
  %9377 = vmatpush.msra.mxu0 %v8869
  %9378 = vmatpush.msra.mxu0 %v8861
  %9379 = vmatpush.msra.mxu0 %v8853
  %9380 = vmatpush.msra.mxu0 %v8845
  %9381 = vmatpush.msra.mxu0 %v8837
  %9382 = vmatpush.msra.mxu0 %v8829
  %9383 = vmatpush.msra.mxu0 %v8821
  %9384 = vmatpush.msra.mxu0 %v8813
  %9385 = vmatpush.msra.mxu0 %v8805
  %9386 = vmatpush.msra.mxu0 %v8797
  %9387 = vmatpush.msra.mxu0 %v8789
  %9388 = vmatmul.f32.gmra.mxu0 %v8390
  %v9389 = vpop.f32.mrf.mxu0
  %v9390 = vadd.f32 %v9370, %v9389
  %9391 = vdwg.mxu0
  %9392 = vmatpush.msra.mxu0 %v8526
  %9393 = vmatpush.msra.mxu0 %v8518
  %9394 = vmatpush.msra.mxu0 %v8510
  %9395 = vmatpush.msra.mxu0 %v8502
  %9396 = vmatpush.msra.mxu0 %v8494
  %9397 = vmatpush.msra.mxu0 %v8486
  %9398 = vmatpush.msra.mxu0 %v8478
  %9399 = vmatpush.msra.mxu0 %v8470
  %9400 = vmatpush.msra.mxu0 %v8462
  %9401 = vmatpush.msra.mxu0 %v8454
  %9402 = vmatpush.msra.mxu0 %v8446
  %9403 = vmatpush.msra.mxu0 %v8438
  %9404 = vmatpush.msra.mxu0 %v8430
  %9405 = vmatpush.msra.mxu0 %v8422
  %9406 = vmatpush.msra.mxu0 %v8414
  %9407 = vmatpush.msra.mxu0 %v8406
  %9408 = vmatmul.f32.gmra.mxu0 %v8387
  %v9409 = vpop.f32.mrf.mxu0
  %v9410 = vadd.f32 0.0, %v9409
  %9411 = vdwg.mxu0
  %9412 = vmatpush.msra.mxu0 %v8654
  %9413 = vmatpush.msra.mxu0 %v8646
  %9414 = vmatpush.msra.mxu0 %v8638
  %9415 = vmatpush.msra.mxu0 %v8630
  %9416 = vmatpush.msra.mxu0 %v8622
  %9417 = vmatpush.msra.mxu0 %v8614
  %9418 = vmatpush.msra.mxu0 %v8606
  %9419 = vmatpush.msra.mxu0 %v8598
  %9420 = vmatpush.msra.mxu0 %v8590
  %9421 = vmatpush.msra.mxu0 %v8582
  %9422 = vmatpush.msra.mxu0 %v8574
  %9423 = vmatpush.msra.mxu0 %v8566
  %9424 = vmatpush.msra.mxu0 %v8558
  %9425 = vmatpush.msra.mxu0 %v8550
  %9426 = vmatpush.msra.mxu0 %v8542
  %9427 = vmatpush.msra.mxu0 %v8534
  %9428 = vmatmul.f32.gmra.mxu0 %v8388
  %v9429 = vpop.f32.mrf.mxu0
  %v9430 = vadd.f32 %v9410, %v9429
  %9431 = vdwg.mxu0
  %9432 = vmatpush.msra.mxu0 %v8782
  %9433 = vmatpush.msra.mxu0 %v8774
  %9434 = vmatpush.msra.mxu0 %v8766
  %9435 = vmatpush.msra.mxu0 %v8758
  %9436 = vmatpush.msra.mxu0 %v8750
  %9437 = vmatpush.msra.mxu0 %v8742
  %9438 = vmatpush.msra.mxu0 %v8734
  %9439 = vmatpush.msra.mxu0 %v8726
  %9440 = vmatpush.msra.mxu0 %v8718
  %9441 = vmatpush.msra.mxu0 %v8710
  %9442 = vmatpush.msra.mxu0 %v8702
  %9443 = vmatpush.msra.mxu0 %v8694
  %9444 = vmatpush.msra.mxu0 %v8686
  %9445 = vmatpush.msra.mxu0 %v8678
  %9446 = vmatpush.msra.mxu0 %v8670
  %9447 = vmatpush.msra.mxu0 %v8662
  %9448 = vmatmul.f32.gmra.mxu0 %v8389
  %v9449 = vpop.f32.mrf.mxu0
  %v9450 = vadd.f32 %v9430, %v9449
  %9451 = vdwg.mxu0
  %9452 = vmatpush.msra.mxu0 %v8910
  %9453 = vmatpush.msra.mxu0 %v8902
  %9454 = vmatpush.msra.mxu0 %v8894
  %9455 = vmatpush.msra.mxu0 %v8886
  %9456 = vmatpush.msra.mxu0 %v8878
  %9457 = vmatpush.msra.mxu0 %v8870
  %9458 = vmatpush.msra.mxu0 %v8862
  %9459 = vmatpush.msra.mxu0 %v8854
  %9460 = vmatpush.msra.mxu0 %v8846
  %9461 = vmatpush.msra.mxu0 %v8838
  %9462 = vmatpush.msra.mxu0 %v8830
  %9463 = vmatpush.msra.mxu0 %v8822
  %9464 = vmatpush.msra.mxu0 %v8814
  %9465 = vmatpush.msra.mxu0 %v8806
  %9466 = vmatpush.msra.mxu0 %v8798
  %9467 = vmatpush.msra.mxu0 %v8790
  %9468 = vmatmul.f32.gmra.mxu0 %v8390
  %v9469 = vpop.f32.mrf.mxu0
  %v9470 = vadd.f32 %v9450, %v9469
  %9471 = vdwg.mxu0
  %9472 = vmatpush.msra.mxu0 %v8527
  %9473 = vmatpush.msra.mxu0 %v8519
  %9474 = vmatpush.msra.mxu0 %v8511
  %9475 = vmatpush.msra.mxu0 %v8503
  %9476 = vmatpush.msra.mxu0 %v8495
  %9477 = vmatpush.msra.mxu0 %v8487
  %9478 = vmatpush.msra.mxu0 %v8479
  %9479 = vmatpush.msra.mxu0 %v8471
  %9480 = vmatpush.msra.mxu0 %v8463
  %9481 = vmatpush.msra.mxu0 %v8455
  %9482 = vmatpush.msra.mxu0 %v8447
  %9483 = vmatpush.msra.mxu0 %v8439
  %9484 = vmatpush.msra.mxu0 %v8431
  %9485 = vmatpush.msra.mxu0 %v8423
  %9486 = vmatpush.msra.mxu0 %v8415
  %9487 = vmatpush.msra.mxu0 %v8407
  %9488 = vmatmul.f32.gmra.mxu0 %v8387
  %v9489 = vpop.f32.mrf.mxu0
  %v9490 = vadd.f32 0.0, %v9489
  %9491 = vdwg.mxu0
  %9492 = vmatpush.msra.mxu0 %v8655
  %9493 = vmatpush.msra.mxu0 %v8647
  %9494 = vmatpush.msra.mxu0 %v8639
  %9495 = vmatpush.msra.mxu0 %v8631
  %9496 = vmatpush.msra.mxu0 %v8623
  %9497 = vmatpush.msra.mxu0 %v8615
  %9498 = vmatpush.msra.mxu0 %v8607
  %9499 = vmatpush.msra.mxu0 %v8599
  %9500 = vmatpush.msra.mxu0 %v8591
  %9501 = vmatpush.msra.mxu0 %v8583
  %9502 = vmatpush.msra.mxu0 %v8575
  %9503 = vmatpush.msra.mxu0 %v8567
  %9504 = vmatpush.msra.mxu0 %v8559
  %9505 = vmatpush.msra.mxu0 %v8551
  %9506 = vmatpush.msra.mxu0 %v8543
  %9507 = vmatpush.msra.mxu0 %v8535
  %9508 = vmatmul.f32.gmra.mxu0 %v8388
  %v9509 = vpop.f32.mrf.mxu0
  %v9510 = vadd.f32 %v9490, %v9509
  %9511 = vdwg.mxu0
  %9512 = vmatpush.msra.mxu0 %v8783
  %9513 = vmatpush.msra.mxu0 %v8775
  %9514 = vmatpush.msra.mxu0 %v8767
  %9515 = vmatpush.msra.mxu0 %v8759
  %9516 = vmatpush.msra.mxu0 %v8751
  %9517 = vmatpush.msra.mxu0 %v8743
  %9518 = vmatpush.msra.mxu0 %v8735
  %9519 = vmatpush.msra.mxu0 %v8727
  %9520 = vmatpush.msra.mxu0 %v8719
  %9521 = vmatpush.msra.mxu0 %v8711
  %9522 = vmatpush.msra.mxu0 %v8703
  %9523 = vmatpush.msra.mxu0 %v8695
  %9524 = vmatpush.msra.mxu0 %v8687
  %9525 = vmatpush.msra.mxu0 %v8679
  %9526 = vmatpush.msra.mxu0 %v8671
  %9527 = vmatpush.msra.mxu0 %v8663
  %9528 = vmatmul.f32.gmra.mxu0 %v8389
  %v9529 = vpop.f32.mrf.mxu0
  %v9530 = vadd.f32 %v9510, %v9529
  %9531 = vdwg.mxu0
  %9532 = vmatpush.msra.mxu0 %v8911
  %9533 = vmatpush.msra.mxu0 %v8903
  %9534 = vmatpush.msra.mxu0 %v8895
  %9535 = vmatpush.msra.mxu0 %v8887
  %9536 = vmatpush.msra.mxu0 %v8879
  %9537 = vmatpush.msra.mxu0 %v8871
  %9538 = vmatpush.msra.mxu0 %v8863
  %9539 = vmatpush.msra.mxu0 %v8855
  %9540 = vmatpush.msra.mxu0 %v8847
  %9541 = vmatpush.msra.mxu0 %v8839
  %9542 = vmatpush.msra.mxu0 %v8831
  %9543 = vmatpush.msra.mxu0 %v8823
  %9544 = vmatpush.msra.mxu0 %v8815
  %9545 = vmatpush.msra.mxu0 %v8807
  %9546 = vmatpush.msra.mxu0 %v8799
  %9547 = vmatpush.msra.mxu0 %v8791
  %9548 = vmatmul.f32.gmra.mxu0 %v8390
  %v9549 = vpop.f32.mrf.mxu0
  %v9550 = vadd.f32 %v9530, %v9549
  %9551 = vdwg.mxu0
  %v9552 = vadd.f32 %v8392, %v8990
  %v9553 = vadd.f32 %v8393, %v9070
  %v9554 = vadd.f32 %v8394, %v9150
  %v9555 = vadd.f32 %v8395, %v9230
  %v9556 = vadd.f32 %v8396, %v9310
  %v9557 = vadd.f32 %v8397, %v9390
  %v9558 = vadd.f32 %v8398, %v9470
  %v9559 = vadd.f32 %v8399, %v9550
  %v9560 = vxor.u32 %v9552, 2147483648
  %v9561 = vxor.u32 %v9553, 2147483648
  %v9562 = vxor.u32 %v9554, 2147483648
  %v9563 = vxor.u32 %v9555, 2147483648
  %v9564 = vxor.u32 %v9556, 2147483648
  %v9565 = vxor.u32 %v9557, 2147483648
  %v9566 = vmul.f32 %v9560, 1.442695
  %v9567 = vpow.pop %v9566
  %v9568 = vmul.f32 %v9561, 1.442695
  %v9569 = vpow.pop %v9568
  %v9570 = vmul.f32 %v9562, 1.442695
  %v9571 = vpow.pop %v9570
  %v9572 = vmul.f32 %v9563, 1.442695
  %v9573 = vpow.pop %v9572
  %v9574 = vmul.f32 %v9564, 1.442695
  %v9575 = vpow.pop %v9574
  %v9576 = vmul.f32 %v9565, 1.442695
  %v9577 = vpow.pop %v9576
  %v9578 = vadd.f32 %v9567, 1.0
  %v9579 = vadd.f32 %v9569, 1.0
  %v9580 = vadd.f32 %v9571, 1.0
  %v9581 = vadd.f32 %v9573, 1.0
  %v9582 = vadd.f32 %v9575, 1.0
  %v9583 = vadd.f32 %v9577, 1.0
  %v9584 = vrcp.pop %v9578
  %v9585 = vmul.f32 %v9578, %v9584
  %v9586 = vsub.f32 1.0, %v9585
  %v9587 = vmul.f32 %v9584, %v9586
  %v9588 = vadd.f32 %v9584, %v9587
  %vm9589 = vweird.f32 %v9578
  %vm9590 = vweird.f32 %v9584
  %vm9591 = vmor %vm9589, %vm9590
  %v9592 = vsel %vm9591, %v9584, %v9588
  %v9593 = vand.u32 2147483647, %v9578
  %vm9594 = vcmp.eq.f32.partialorder %v9593, 8.507059e+37
  %v9595 = vand.u32 %v9578, 2147483648
  %v9596 = vor.u32 1.1754944e-38, %v9595
  %v9597 = vsel %vm9594, %v9596, %v9592
  %v9598 = vmul.f32 1.0, %v9597
  %v9599 = vrcp.pop %v9579
  %v9600 = vmul.f32 %v9579, %v9599
  %v9601 = vsub.f32 1.0, %v9600
  %v9602 = vmul.f32 %v9599, %v9601
  %v9603 = vadd.f32 %v9599, %v9602
  %vm9604 = vweird.f32 %v9579
  %vm9605 = vweird.f32 %v9599
  %vm9606 = vmor %vm9604, %vm9605
  %v9607 = vsel %vm9606, %v9599, %v9603
  %v9608 = vand.u32 2147483647, %v9579
  %vm9609 = vcmp.eq.f32.partialorder %v9608, 8.507059e+37
  %v9610 = vand.u32 %v9579, 2147483648
  %v9611 = vor.u32 1.1754944e-38, %v9610
  %v9612 = vsel %vm9609, %v9611, %v9607
  %v9613 = vmul.f32 1.0, %v9612
  %v9614 = vrcp.pop %v9580
  %v9615 = vmul.f32 %v9580, %v9614
  %v9616 = vsub.f32 1.0, %v9615
  %v9617 = vmul.f32 %v9614, %v9616
  %v9618 = vadd.f32 %v9614, %v9617
  %vm9619 = vweird.f32 %v9580
  %vm9620 = vweird.f32 %v9614
  %vm9621 = vmor %vm9619, %vm9620
  %v9622 = vsel %vm9621, %v9614, %v9618
  %v9623 = vand.u32 2147483647, %v9580
  %vm9624 = vcmp.eq.f32.partialorder %v9623, 8.507059e+37
  %v9625 = vand.u32 %v9580, 2147483648
  %v9626 = vor.u32 1.1754944e-38, %v9625
  %v9627 = vsel %vm9624, %v9626, %v9622
  %v9628 = vmul.f32 1.0, %v9627
  %v9629 = vrcp.pop %v9581
  %v9630 = vmul.f32 %v9581, %v9629
  %v9631 = vsub.f32 1.0, %v9630
  %v9632 = vmul.f32 %v9629, %v9631
  %v9633 = vadd.f32 %v9629, %v9632
  %vm9634 = vweird.f32 %v9581
  %vm9635 = vweird.f32 %v9629
  %vm9636 = vmor %vm9634, %vm9635
  %v9637 = vsel %vm9636, %v9629, %v9633
  %v9638 = vand.u32 2147483647, %v9581
  %vm9639 = vcmp.eq.f32.partialorder %v9638, 8.507059e+37
  %v9640 = vand.u32 %v9581, 2147483648
  %v9641 = vor.u32 1.1754944e-38, %v9640
  %v9642 = vsel %vm9639, %v9641, %v9637
  %v9643 = vmul.f32 1.0, %v9642
  %v9644 = vrcp.pop %v9582
  %v9645 = vmul.f32 %v9582, %v9644
  %v9646 = vsub.f32 1.0, %v9645
  %v9647 = vmul.f32 %v9644, %v9646
  %v9648 = vadd.f32 %v9644, %v9647
  %vm9649 = vweird.f32 %v9582
  %vm9650 = vweird.f32 %v9644
  %vm9651 = vmor %vm9649, %vm9650
  %v9652 = vsel %vm9651, %v9644, %v9648
  %v9653 = vand.u32 2147483647, %v9582
  %vm9654 = vcmp.eq.f32.partialorder %v9653, 8.507059e+37
  %v9655 = vand.u32 %v9582, 2147483648
  %v9656 = vor.u32 1.1754944e-38, %v9655
  %v9657 = vsel %vm9654, %v9656, %v9652
  %v9658 = vmul.f32 1.0, %v9657
  %v9659 = vrcp.pop %v9583
  %v9660 = vmul.f32 %v9583, %v9659
  %v9661 = vsub.f32 1.0, %v9660
  %v9662 = vmul.f32 %v9659, %v9661
  %v9663 = vadd.f32 %v9659, %v9662
  %vm9664 = vweird.f32 %v9583
  %vm9665 = vweird.f32 %v9659
  %vm9666 = vmor %vm9664, %vm9665
  %v9667 = vsel %vm9666, %v9659, %v9663
  %v9668 = vand.u32 2147483647, %v9583
  %vm9669 = vcmp.eq.f32.partialorder %v9668, 8.507059e+37
  %v9670 = vand.u32 %v9583, 2147483648
  %v9671 = vor.u32 1.1754944e-38, %v9670
  %v9672 = vsel %vm9669, %v9671, %v9667
  %v9673 = vmul.f32 1.0, %v9672
  %v9674 = vtanh.pop %v9558
  %v9675 = vtanh.pop %v9559
  %v9676 = vmul.f32 %v9628, %v8375
  %v9677 = vmul.f32 %v9643, %v8376
  %v9678 = vmul.f32 %v9598, %v9674
  %v9679 = vmul.f32 %v9613, %v9675
  %v9680 = vadd.f32 %v9676, %v9678
  %v9681 = vadd.f32 %v9677, %v9679
  %v9682 = vtanh.pop %v9680
  %v9683 = vtanh.pop %v9681
  %v9684 = vmul.f32 %v9658, %v9682
  %v9685 = vmul.f32 %v9673, %v9683
  %s9686 = scalar_lea.vmem [#allocation3], 96
  %9687 = vst [vmem:[%s9686] sm:$0xff] %v9684
  %9688 = vst [vmem:[%s9686 + $0x8] sm:$0xff] %v9685
  %s9689 = scalar_lea.vmem [#allocation4], 16
  %9690 = vst [vmem:[%s9689] sm:$0xff] %v9684
  %9691 = vst [vmem:[%s9689 + $0x8] sm:$0xff] %v9685
  %v9692 = vmul.f32 %v9684, %v555
  %v9693 = vmul.f32 %v9685, %v555
  %v9694 = vmul.f32 %v9684, %v560
  %v9695 = vmul.f32 %v9685, %v560
  %s9696 = scalar_lea.vmem [#allocation2], 448
  %v9697 = vld [vmem:[%s9696] sm:$0xff]
  %v9698 = vld [vmem:[%s9696 + $0x8] sm:$0xff]
  %v9699 = vld [vmem:[%s9696 + $0x10] sm:$0xff]
  %v9700 = vld [vmem:[%s9696 + $0x18] sm:$0xff]
  %v9701 = vld [vmem:[%s9696 + $0x20] sm:$0xff]
  %v9702 = vld [vmem:[%s9696 + $0x28] sm:$0xff]
  %v9703 = vld [vmem:[%s9696 + $0x30] sm:$0xff]
  %v9704 = vld [vmem:[%s9696 + $0x38] sm:$0xff]
  %v9705 = vld [vmem:[%s2] sm:$0xff]
  %v9706 = vld [vmem:[%s2 + $0x8] sm:$0xff]
  %v9707 = vld [vmem:[%s2 + $0x10] sm:$0xff]
  %v9708 = vld [vmem:[%s2 + $0x18] sm:$0xff]
  %v9709 = vld [vmem:[%s2 + $0x20] sm:$0xff]
  %v9710 = vld [vmem:[%s2 + $0x28] sm:$0xff]
  %v9711 = vld [vmem:[%s2 + $0x30] sm:$0xff]
  %v9712 = vld [vmem:[%s2 + $0x38] sm:$0xff]
  %v9713 = vld [vmem:[%s2 + $0x40] sm:$0xff]
  %v9714 = vld [vmem:[%s2 + $0x48] sm:$0xff]
  %v9715 = vld [vmem:[%s2 + $0x50] sm:$0xff]
  %v9716 = vld [vmem:[%s2 + $0x58] sm:$0xff]
  %v9717 = vld [vmem:[%s2 + $0x60] sm:$0xff]
  %v9718 = vld [vmem:[%s2 + $0x68] sm:$0xff]
  %v9719 = vld [vmem:[%s2 + $0x70] sm:$0xff]
  %v9720 = vld [vmem:[%s2 + $0x78] sm:$0xff]
  %v9721 = vld [vmem:[%s2 + $0x80] sm:$0xff]
  %v9722 = vld [vmem:[%s2 + $0x88] sm:$0xff]
  %v9723 = vld [vmem:[%s2 + $0x90] sm:$0xff]
  %v9724 = vld [vmem:[%s2 + $0x98] sm:$0xff]
  %v9725 = vld [vmem:[%s2 + $0xa0] sm:$0xff]
  %v9726 = vld [vmem:[%s2 + $0xa8] sm:$0xff]
  %v9727 = vld [vmem:[%s2 + $0xb0] sm:$0xff]
  %v9728 = vld [vmem:[%s2 + $0xb8] sm:$0xff]
  %v9729 = vld [vmem:[%s2 + $0xc0] sm:$0xff]
  %v9730 = vld [vmem:[%s2 + $0xc8] sm:$0xff]
  %v9731 = vld [vmem:[%s2 + $0xd0] sm:$0xff]
  %v9732 = vld [vmem:[%s2 + $0xd8] sm:$0xff]
  %v9733 = vld [vmem:[%s2 + $0xe0] sm:$0xff]
  %v9734 = vld [vmem:[%s2 + $0xe8] sm:$0xff]
  %v9735 = vld [vmem:[%s2 + $0xf0] sm:$0xff]
  %v9736 = vld [vmem:[%s2 + $0xf8] sm:$0xff]
  %v9737 = vld [vmem:[%s2 + $0x100] sm:$0xff]
  %v9738 = vld [vmem:[%s2 + $0x108] sm:$0xff]
  %v9739 = vld [vmem:[%s2 + $0x110] sm:$0xff]
  %v9740 = vld [vmem:[%s2 + $0x118] sm:$0xff]
  %v9741 = vld [vmem:[%s2 + $0x120] sm:$0xff]
  %v9742 = vld [vmem:[%s2 + $0x128] sm:$0xff]
  %v9743 = vld [vmem:[%s2 + $0x130] sm:$0xff]
  %v9744 = vld [vmem:[%s2 + $0x138] sm:$0xff]
  %v9745 = vld [vmem:[%s2 + $0x140] sm:$0xff]
  %v9746 = vld [vmem:[%s2 + $0x148] sm:$0xff]
  %v9747 = vld [vmem:[%s2 + $0x150] sm:$0xff]
  %v9748 = vld [vmem:[%s2 + $0x158] sm:$0xff]
  %v9749 = vld [vmem:[%s2 + $0x160] sm:$0xff]
  %v9750 = vld [vmem:[%s2 + $0x168] sm:$0xff]
  %v9751 = vld [vmem:[%s2 + $0x170] sm:$0xff]
  %v9752 = vld [vmem:[%s2 + $0x178] sm:$0xff]
  %v9753 = vld [vmem:[%s2 + $0x180] sm:$0xff]
  %v9754 = vld [vmem:[%s2 + $0x188] sm:$0xff]
  %v9755 = vld [vmem:[%s2 + $0x190] sm:$0xff]
  %v9756 = vld [vmem:[%s2 + $0x198] sm:$0xff]
  %v9757 = vld [vmem:[%s2 + $0x1a0] sm:$0xff]
  %v9758 = vld [vmem:[%s2 + $0x1a8] sm:$0xff]
  %v9759 = vld [vmem:[%s2 + $0x1b0] sm:$0xff]
  %v9760 = vld [vmem:[%s2 + $0x1b8] sm:$0xff]
  %v9761 = vld [vmem:[%s2 + $0x1c0] sm:$0xff]
  %v9762 = vld [vmem:[%s2 + $0x1c8] sm:$0xff]
  %v9763 = vld [vmem:[%s2 + $0x1d0] sm:$0xff]
  %v9764 = vld [vmem:[%s2 + $0x1d8] sm:$0xff]
  %v9765 = vld [vmem:[%s2 + $0x1e0] sm:$0xff]
  %v9766 = vld [vmem:[%s2 + $0x1e8] sm:$0xff]
  %v9767 = vld [vmem:[%s2 + $0x1f0] sm:$0xff]
  %v9768 = vld [vmem:[%s2 + $0x1f8] sm:$0xff]
  %v9769 = vld [vmem:[%s2 + $0x200] sm:$0xff]
  %v9770 = vld [vmem:[%s2 + $0x208] sm:$0xff]
  %v9771 = vld [vmem:[%s2 + $0x210] sm:$0xff]
  %v9772 = vld [vmem:[%s2 + $0x218] sm:$0xff]
  %v9773 = vld [vmem:[%s2 + $0x220] sm:$0xff]
  %v9774 = vld [vmem:[%s2 + $0x228] sm:$0xff]
  %v9775 = vld [vmem:[%s2 + $0x230] sm:$0xff]
  %v9776 = vld [vmem:[%s2 + $0x238] sm:$0xff]
  %v9777 = vld [vmem:[%s2 + $0x240] sm:$0xff]
  %v9778 = vld [vmem:[%s2 + $0x248] sm:$0xff]
  %v9779 = vld [vmem:[%s2 + $0x250] sm:$0xff]
  %v9780 = vld [vmem:[%s2 + $0x258] sm:$0xff]
  %v9781 = vld [vmem:[%s2 + $0x260] sm:$0xff]
  %v9782 = vld [vmem:[%s2 + $0x268] sm:$0xff]
  %v9783 = vld [vmem:[%s2 + $0x270] sm:$0xff]
  %v9784 = vld [vmem:[%s2 + $0x278] sm:$0xff]
  %v9785 = vld [vmem:[%s2 + $0x280] sm:$0xff]
  %v9786 = vld [vmem:[%s2 + $0x288] sm:$0xff]
  %v9787 = vld [vmem:[%s2 + $0x290] sm:$0xff]
  %v9788 = vld [vmem:[%s2 + $0x298] sm:$0xff]
  %v9789 = vld [vmem:[%s2 + $0x2a0] sm:$0xff]
  %v9790 = vld [vmem:[%s2 + $0x2a8] sm:$0xff]
  %v9791 = vld [vmem:[%s2 + $0x2b0] sm:$0xff]
  %v9792 = vld [vmem:[%s2 + $0x2b8] sm:$0xff]
  %v9793 = vld [vmem:[%s2 + $0x2c0] sm:$0xff]
  %v9794 = vld [vmem:[%s2 + $0x2c8] sm:$0xff]
  %v9795 = vld [vmem:[%s2 + $0x2d0] sm:$0xff]
  %v9796 = vld [vmem:[%s2 + $0x2d8] sm:$0xff]
  %v9797 = vld [vmem:[%s2 + $0x2e0] sm:$0xff]
  %v9798 = vld [vmem:[%s2 + $0x2e8] sm:$0xff]
  %v9799 = vld [vmem:[%s2 + $0x2f0] sm:$0xff]
  %v9800 = vld [vmem:[%s2 + $0x2f8] sm:$0xff]
  %v9801 = vld [vmem:[%s2 + $0x300] sm:$0xff]
  %v9802 = vld [vmem:[%s2 + $0x308] sm:$0xff]
  %v9803 = vld [vmem:[%s2 + $0x310] sm:$0xff]
  %v9804 = vld [vmem:[%s2 + $0x318] sm:$0xff]
  %v9805 = vld [vmem:[%s2 + $0x320] sm:$0xff]
  %v9806 = vld [vmem:[%s2 + $0x328] sm:$0xff]
  %v9807 = vld [vmem:[%s2 + $0x330] sm:$0xff]
  %v9808 = vld [vmem:[%s2 + $0x338] sm:$0xff]
  %v9809 = vld [vmem:[%s2 + $0x340] sm:$0xff]
  %v9810 = vld [vmem:[%s2 + $0x348] sm:$0xff]
  %v9811 = vld [vmem:[%s2 + $0x350] sm:$0xff]
  %v9812 = vld [vmem:[%s2 + $0x358] sm:$0xff]
  %v9813 = vld [vmem:[%s2 + $0x360] sm:$0xff]
  %v9814 = vld [vmem:[%s2 + $0x368] sm:$0xff]
  %v9815 = vld [vmem:[%s2 + $0x370] sm:$0xff]
  %v9816 = vld [vmem:[%s2 + $0x378] sm:$0xff]
  %v9817 = vld [vmem:[%s2 + $0x380] sm:$0xff]
  %v9818 = vld [vmem:[%s2 + $0x388] sm:$0xff]
  %v9819 = vld [vmem:[%s2 + $0x390] sm:$0xff]
  %v9820 = vld [vmem:[%s2 + $0x398] sm:$0xff]
  %v9821 = vld [vmem:[%s2 + $0x3a0] sm:$0xff]
  %v9822 = vld [vmem:[%s2 + $0x3a8] sm:$0xff]
  %v9823 = vld [vmem:[%s2 + $0x3b0] sm:$0xff]
  %v9824 = vld [vmem:[%s2 + $0x3b8] sm:$0xff]
  %v9825 = vld [vmem:[%s2 + $0x3c0] sm:$0xff]
  %v9826 = vld [vmem:[%s2 + $0x3c8] sm:$0xff]
  %v9827 = vld [vmem:[%s2 + $0x3d0] sm:$0xff]
  %v9828 = vld [vmem:[%s2 + $0x3d8] sm:$0xff]
  %v9829 = vld [vmem:[%s2 + $0x3e0] sm:$0xff]
  %v9830 = vld [vmem:[%s2 + $0x3e8] sm:$0xff]
  %v9831 = vld [vmem:[%s2 + $0x3f0] sm:$0xff]
  %v9832 = vld [vmem:[%s2 + $0x3f8] sm:$0xff]
  %v9833 = vld [vmem:[%s2 + $0x400] sm:$0xff]
  %v9834 = vld [vmem:[%s2 + $0x408] sm:$0xff]
  %v9835 = vld [vmem:[%s2 + $0x410] sm:$0xff]
  %v9836 = vld [vmem:[%s2 + $0x418] sm:$0xff]
  %v9837 = vld [vmem:[%s2 + $0x420] sm:$0xff]
  %v9838 = vld [vmem:[%s2 + $0x428] sm:$0xff]
  %v9839 = vld [vmem:[%s2 + $0x430] sm:$0xff]
  %v9840 = vld [vmem:[%s2 + $0x438] sm:$0xff]
  %v9841 = vld [vmem:[%s2 + $0x440] sm:$0xff]
  %v9842 = vld [vmem:[%s2 + $0x448] sm:$0xff]
  %v9843 = vld [vmem:[%s2 + $0x450] sm:$0xff]
  %v9844 = vld [vmem:[%s2 + $0x458] sm:$0xff]
  %v9845 = vld [vmem:[%s2 + $0x460] sm:$0xff]
  %v9846 = vld [vmem:[%s2 + $0x468] sm:$0xff]
  %v9847 = vld [vmem:[%s2 + $0x470] sm:$0xff]
  %v9848 = vld [vmem:[%s2 + $0x478] sm:$0xff]
  %v9849 = vld [vmem:[%s2 + $0x480] sm:$0xff]
  %v9850 = vld [vmem:[%s2 + $0x488] sm:$0xff]
  %v9851 = vld [vmem:[%s2 + $0x490] sm:$0xff]
  %v9852 = vld [vmem:[%s2 + $0x498] sm:$0xff]
  %v9853 = vld [vmem:[%s2 + $0x4a0] sm:$0xff]
  %v9854 = vld [vmem:[%s2 + $0x4a8] sm:$0xff]
  %v9855 = vld [vmem:[%s2 + $0x4b0] sm:$0xff]
  %v9856 = vld [vmem:[%s2 + $0x4b8] sm:$0xff]
  %v9857 = vld [vmem:[%s2 + $0x4c0] sm:$0xff]
  %v9858 = vld [vmem:[%s2 + $0x4c8] sm:$0xff]
  %v9859 = vld [vmem:[%s2 + $0x4d0] sm:$0xff]
  %v9860 = vld [vmem:[%s2 + $0x4d8] sm:$0xff]
  %v9861 = vld [vmem:[%s2 + $0x4e0] sm:$0xff]
  %v9862 = vld [vmem:[%s2 + $0x4e8] sm:$0xff]
  %v9863 = vld [vmem:[%s2 + $0x4f0] sm:$0xff]
  %v9864 = vld [vmem:[%s2 + $0x4f8] sm:$0xff]
  %v9865 = vld [vmem:[%s2 + $0x500] sm:$0xff]
  %v9866 = vld [vmem:[%s2 + $0x508] sm:$0xff]
  %v9867 = vld [vmem:[%s2 + $0x510] sm:$0xff]
  %v9868 = vld [vmem:[%s2 + $0x518] sm:$0xff]
  %v9869 = vld [vmem:[%s2 + $0x520] sm:$0xff]
  %v9870 = vld [vmem:[%s2 + $0x528] sm:$0xff]
  %v9871 = vld [vmem:[%s2 + $0x530] sm:$0xff]
  %v9872 = vld [vmem:[%s2 + $0x538] sm:$0xff]
  %v9873 = vld [vmem:[%s2 + $0x540] sm:$0xff]
  %v9874 = vld [vmem:[%s2 + $0x548] sm:$0xff]
  %v9875 = vld [vmem:[%s2 + $0x550] sm:$0xff]
  %v9876 = vld [vmem:[%s2 + $0x558] sm:$0xff]
  %v9877 = vld [vmem:[%s2 + $0x560] sm:$0xff]
  %v9878 = vld [vmem:[%s2 + $0x568] sm:$0xff]
  %v9879 = vld [vmem:[%s2 + $0x570] sm:$0xff]
  %v9880 = vld [vmem:[%s2 + $0x578] sm:$0xff]
  %v9881 = vld [vmem:[%s2 + $0x580] sm:$0xff]
  %v9882 = vld [vmem:[%s2 + $0x588] sm:$0xff]
  %v9883 = vld [vmem:[%s2 + $0x590] sm:$0xff]
  %v9884 = vld [vmem:[%s2 + $0x598] sm:$0xff]
  %v9885 = vld [vmem:[%s2 + $0x5a0] sm:$0xff]
  %v9886 = vld [vmem:[%s2 + $0x5a8] sm:$0xff]
  %v9887 = vld [vmem:[%s2 + $0x5b0] sm:$0xff]
  %v9888 = vld [vmem:[%s2 + $0x5b8] sm:$0xff]
  %v9889 = vld [vmem:[%s2 + $0x5c0] sm:$0xff]
  %v9890 = vld [vmem:[%s2 + $0x5c8] sm:$0xff]
  %v9891 = vld [vmem:[%s2 + $0x5d0] sm:$0xff]
  %v9892 = vld [vmem:[%s2 + $0x5d8] sm:$0xff]
  %v9893 = vld [vmem:[%s2 + $0x5e0] sm:$0xff]
  %v9894 = vld [vmem:[%s2 + $0x5e8] sm:$0xff]
  %v9895 = vld [vmem:[%s2 + $0x5f0] sm:$0xff]
  %v9896 = vld [vmem:[%s2 + $0x5f8] sm:$0xff]
  %v9897 = vld [vmem:[%s2 + $0x600] sm:$0xff]
  %v9898 = vld [vmem:[%s2 + $0x608] sm:$0xff]
  %v9899 = vld [vmem:[%s2 + $0x610] sm:$0xff]
  %v9900 = vld [vmem:[%s2 + $0x618] sm:$0xff]
  %v9901 = vld [vmem:[%s2 + $0x620] sm:$0xff]
  %v9902 = vld [vmem:[%s2 + $0x628] sm:$0xff]
  %v9903 = vld [vmem:[%s2 + $0x630] sm:$0xff]
  %v9904 = vld [vmem:[%s2 + $0x638] sm:$0xff]
  %v9905 = vld [vmem:[%s2 + $0x640] sm:$0xff]
  %v9906 = vld [vmem:[%s2 + $0x648] sm:$0xff]
  %v9907 = vld [vmem:[%s2 + $0x650] sm:$0xff]
  %v9908 = vld [vmem:[%s2 + $0x658] sm:$0xff]
  %v9909 = vld [vmem:[%s2 + $0x660] sm:$0xff]
  %v9910 = vld [vmem:[%s2 + $0x668] sm:$0xff]
  %v9911 = vld [vmem:[%s2 + $0x670] sm:$0xff]
  %v9912 = vld [vmem:[%s2 + $0x678] sm:$0xff]
  %v9913 = vld [vmem:[%s2 + $0x680] sm:$0xff]
  %v9914 = vld [vmem:[%s2 + $0x688] sm:$0xff]
  %v9915 = vld [vmem:[%s2 + $0x690] sm:$0xff]
  %v9916 = vld [vmem:[%s2 + $0x698] sm:$0xff]
  %v9917 = vld [vmem:[%s2 + $0x6a0] sm:$0xff]
  %v9918 = vld [vmem:[%s2 + $0x6a8] sm:$0xff]
  %v9919 = vld [vmem:[%s2 + $0x6b0] sm:$0xff]
  %v9920 = vld [vmem:[%s2 + $0x6b8] sm:$0xff]
  %v9921 = vld [vmem:[%s2 + $0x6c0] sm:$0xff]
  %v9922 = vld [vmem:[%s2 + $0x6c8] sm:$0xff]
  %v9923 = vld [vmem:[%s2 + $0x6d0] sm:$0xff]
  %v9924 = vld [vmem:[%s2 + $0x6d8] sm:$0xff]
  %v9925 = vld [vmem:[%s2 + $0x6e0] sm:$0xff]
  %v9926 = vld [vmem:[%s2 + $0x6e8] sm:$0xff]
  %v9927 = vld [vmem:[%s2 + $0x6f0] sm:$0xff]
  %v9928 = vld [vmem:[%s2 + $0x6f8] sm:$0xff]
  %v9929 = vld [vmem:[%s2 + $0x700] sm:$0xff]
  %v9930 = vld [vmem:[%s2 + $0x708] sm:$0xff]
  %v9931 = vld [vmem:[%s2 + $0x710] sm:$0xff]
  %v9932 = vld [vmem:[%s2 + $0x718] sm:$0xff]
  %v9933 = vld [vmem:[%s2 + $0x720] sm:$0xff]
  %v9934 = vld [vmem:[%s2 + $0x728] sm:$0xff]
  %v9935 = vld [vmem:[%s2 + $0x730] sm:$0xff]
  %v9936 = vld [vmem:[%s2 + $0x738] sm:$0xff]
  %v9937 = vld [vmem:[%s2 + $0x740] sm:$0xff]
  %v9938 = vld [vmem:[%s2 + $0x748] sm:$0xff]
  %v9939 = vld [vmem:[%s2 + $0x750] sm:$0xff]
  %v9940 = vld [vmem:[%s2 + $0x758] sm:$0xff]
  %v9941 = vld [vmem:[%s2 + $0x760] sm:$0xff]
  %v9942 = vld [vmem:[%s2 + $0x768] sm:$0xff]
  %v9943 = vld [vmem:[%s2 + $0x770] sm:$0xff]
  %v9944 = vld [vmem:[%s2 + $0x778] sm:$0xff]
  %v9945 = vld [vmem:[%s2 + $0x780] sm:$0xff]
  %v9946 = vld [vmem:[%s2 + $0x788] sm:$0xff]
  %v9947 = vld [vmem:[%s2 + $0x790] sm:$0xff]
  %v9948 = vld [vmem:[%s2 + $0x798] sm:$0xff]
  %v9949 = vld [vmem:[%s2 + $0x7a0] sm:$0xff]
  %v9950 = vld [vmem:[%s2 + $0x7a8] sm:$0xff]
  %v9951 = vld [vmem:[%s2 + $0x7b0] sm:$0xff]
  %v9952 = vld [vmem:[%s2 + $0x7b8] sm:$0xff]
  %v9953 = vld [vmem:[%s2 + $0x7c0] sm:$0xff]
  %v9954 = vld [vmem:[%s2 + $0x7c8] sm:$0xff]
  %v9955 = vld [vmem:[%s2 + $0x7d0] sm:$0xff]
  %v9956 = vld [vmem:[%s2 + $0x7d8] sm:$0xff]
  %v9957 = vld [vmem:[%s2 + $0x7e0] sm:$0xff]
  %v9958 = vld [vmem:[%s2 + $0x7e8] sm:$0xff]
  %v9959 = vld [vmem:[%s2 + $0x7f0] sm:$0xff]
  %v9960 = vld [vmem:[%s2 + $0x7f8] sm:$0xff]
  %v9961 = vld [vmem:[%s2 + $0x800] sm:$0xff]
  %v9962 = vld [vmem:[%s2 + $0x808] sm:$0xff]
  %v9963 = vld [vmem:[%s2 + $0x810] sm:$0xff]
  %v9964 = vld [vmem:[%s2 + $0x818] sm:$0xff]
  %v9965 = vld [vmem:[%s2 + $0x820] sm:$0xff]
  %v9966 = vld [vmem:[%s2 + $0x828] sm:$0xff]
  %v9967 = vld [vmem:[%s2 + $0x830] sm:$0xff]
  %v9968 = vld [vmem:[%s2 + $0x838] sm:$0xff]
  %v9969 = vld [vmem:[%s2 + $0x840] sm:$0xff]
  %v9970 = vld [vmem:[%s2 + $0x848] sm:$0xff]
  %v9971 = vld [vmem:[%s2 + $0x850] sm:$0xff]
  %v9972 = vld [vmem:[%s2 + $0x858] sm:$0xff]
  %v9973 = vld [vmem:[%s2 + $0x860] sm:$0xff]
  %v9974 = vld [vmem:[%s2 + $0x868] sm:$0xff]
  %v9975 = vld [vmem:[%s2 + $0x870] sm:$0xff]
  %v9976 = vld [vmem:[%s2 + $0x878] sm:$0xff]
  %v9977 = vld [vmem:[%s2 + $0x880] sm:$0xff]
  %v9978 = vld [vmem:[%s2 + $0x888] sm:$0xff]
  %v9979 = vld [vmem:[%s2 + $0x890] sm:$0xff]
  %v9980 = vld [vmem:[%s2 + $0x898] sm:$0xff]
  %v9981 = vld [vmem:[%s2 + $0x8a0] sm:$0xff]
  %v9982 = vld [vmem:[%s2 + $0x8a8] sm:$0xff]
  %v9983 = vld [vmem:[%s2 + $0x8b0] sm:$0xff]
  %v9984 = vld [vmem:[%s2 + $0x8b8] sm:$0xff]
  %v9985 = vld [vmem:[%s2 + $0x8c0] sm:$0xff]
  %v9986 = vld [vmem:[%s2 + $0x8c8] sm:$0xff]
  %v9987 = vld [vmem:[%s2 + $0x8d0] sm:$0xff]
  %v9988 = vld [vmem:[%s2 + $0x8d8] sm:$0xff]
  %v9989 = vld [vmem:[%s2 + $0x8e0] sm:$0xff]
  %v9990 = vld [vmem:[%s2 + $0x8e8] sm:$0xff]
  %v9991 = vld [vmem:[%s2 + $0x8f0] sm:$0xff]
  %v9992 = vld [vmem:[%s2 + $0x8f8] sm:$0xff]
  %v9993 = vld [vmem:[%s2 + $0x900] sm:$0xff]
  %v9994 = vld [vmem:[%s2 + $0x908] sm:$0xff]
  %v9995 = vld [vmem:[%s2 + $0x910] sm:$0xff]
  %v9996 = vld [vmem:[%s2 + $0x918] sm:$0xff]
  %v9997 = vld [vmem:[%s2 + $0x920] sm:$0xff]
  %v9998 = vld [vmem:[%s2 + $0x928] sm:$0xff]
  %v9999 = vld [vmem:[%s2 + $0x930] sm:$0xff]
  %v10000 = vld [vmem:[%s2 + $0x938] sm:$0xff]
  %v10001 = vld [vmem:[%s2 + $0x940] sm:$0xff]
  %v10002 = vld [vmem:[%s2 + $0x948] sm:$0xff]
  %v10003 = vld [vmem:[%s2 + $0x950] sm:$0xff]
  %v10004 = vld [vmem:[%s2 + $0x958] sm:$0xff]
  %v10005 = vld [vmem:[%s2 + $0x960] sm:$0xff]
  %v10006 = vld [vmem:[%s2 + $0x968] sm:$0xff]
  %v10007 = vld [vmem:[%s2 + $0x970] sm:$0xff]
  %v10008 = vld [vmem:[%s2 + $0x978] sm:$0xff]
  %v10009 = vld [vmem:[%s2 + $0x980] sm:$0xff]
  %v10010 = vld [vmem:[%s2 + $0x988] sm:$0xff]
  %v10011 = vld [vmem:[%s2 + $0x990] sm:$0xff]
  %v10012 = vld [vmem:[%s2 + $0x998] sm:$0xff]
  %v10013 = vld [vmem:[%s2 + $0x9a0] sm:$0xff]
  %v10014 = vld [vmem:[%s2 + $0x9a8] sm:$0xff]
  %v10015 = vld [vmem:[%s2 + $0x9b0] sm:$0xff]
  %v10016 = vld [vmem:[%s2 + $0x9b8] sm:$0xff]
  %v10017 = vld [vmem:[%s2 + $0x9c0] sm:$0xff]
  %v10018 = vld [vmem:[%s2 + $0x9c8] sm:$0xff]
  %v10019 = vld [vmem:[%s2 + $0x9d0] sm:$0xff]
  %v10020 = vld [vmem:[%s2 + $0x9d8] sm:$0xff]
  %v10021 = vld [vmem:[%s2 + $0x9e0] sm:$0xff]
  %v10022 = vld [vmem:[%s2 + $0x9e8] sm:$0xff]
  %v10023 = vld [vmem:[%s2 + $0x9f0] sm:$0xff]
  %v10024 = vld [vmem:[%s2 + $0x9f8] sm:$0xff]
  %v10025 = vld [vmem:[%s2 + $0xa00] sm:$0xff]
  %v10026 = vld [vmem:[%s2 + $0xa08] sm:$0xff]
  %v10027 = vld [vmem:[%s2 + $0xa10] sm:$0xff]
  %v10028 = vld [vmem:[%s2 + $0xa18] sm:$0xff]
  %v10029 = vld [vmem:[%s2 + $0xa20] sm:$0xff]
  %v10030 = vld [vmem:[%s2 + $0xa28] sm:$0xff]
  %v10031 = vld [vmem:[%s2 + $0xa30] sm:$0xff]
  %v10032 = vld [vmem:[%s2 + $0xa38] sm:$0xff]
  %v10033 = vld [vmem:[%s2 + $0xa40] sm:$0xff]
  %v10034 = vld [vmem:[%s2 + $0xa48] sm:$0xff]
  %v10035 = vld [vmem:[%s2 + $0xa50] sm:$0xff]
  %v10036 = vld [vmem:[%s2 + $0xa58] sm:$0xff]
  %v10037 = vld [vmem:[%s2 + $0xa60] sm:$0xff]
  %v10038 = vld [vmem:[%s2 + $0xa68] sm:$0xff]
  %v10039 = vld [vmem:[%s2 + $0xa70] sm:$0xff]
  %v10040 = vld [vmem:[%s2 + $0xa78] sm:$0xff]
  %v10041 = vld [vmem:[%s2 + $0xa80] sm:$0xff]
  %v10042 = vld [vmem:[%s2 + $0xa88] sm:$0xff]
  %v10043 = vld [vmem:[%s2 + $0xa90] sm:$0xff]
  %v10044 = vld [vmem:[%s2 + $0xa98] sm:$0xff]
  %v10045 = vld [vmem:[%s2 + $0xaa0] sm:$0xff]
  %v10046 = vld [vmem:[%s2 + $0xaa8] sm:$0xff]
  %v10047 = vld [vmem:[%s2 + $0xab0] sm:$0xff]
  %v10048 = vld [vmem:[%s2 + $0xab8] sm:$0xff]
  %v10049 = vld [vmem:[%s2 + $0xac0] sm:$0xff]
  %v10050 = vld [vmem:[%s2 + $0xac8] sm:$0xff]
  %v10051 = vld [vmem:[%s2 + $0xad0] sm:$0xff]
  %v10052 = vld [vmem:[%s2 + $0xad8] sm:$0xff]
  %v10053 = vld [vmem:[%s2 + $0xae0] sm:$0xff]
  %v10054 = vld [vmem:[%s2 + $0xae8] sm:$0xff]
  %v10055 = vld [vmem:[%s2 + $0xaf0] sm:$0xff]
  %v10056 = vld [vmem:[%s2 + $0xaf8] sm:$0xff]
  %v10057 = vld [vmem:[%s2 + $0xb00] sm:$0xff]
  %v10058 = vld [vmem:[%s2 + $0xb08] sm:$0xff]
  %v10059 = vld [vmem:[%s2 + $0xb10] sm:$0xff]
  %v10060 = vld [vmem:[%s2 + $0xb18] sm:$0xff]
  %v10061 = vld [vmem:[%s2 + $0xb20] sm:$0xff]
  %v10062 = vld [vmem:[%s2 + $0xb28] sm:$0xff]
  %v10063 = vld [vmem:[%s2 + $0xb30] sm:$0xff]
  %v10064 = vld [vmem:[%s2 + $0xb38] sm:$0xff]
  %v10065 = vld [vmem:[%s2 + $0xb40] sm:$0xff]
  %v10066 = vld [vmem:[%s2 + $0xb48] sm:$0xff]
  %v10067 = vld [vmem:[%s2 + $0xb50] sm:$0xff]
  %v10068 = vld [vmem:[%s2 + $0xb58] sm:$0xff]
  %v10069 = vld [vmem:[%s2 + $0xb60] sm:$0xff]
  %v10070 = vld [vmem:[%s2 + $0xb68] sm:$0xff]
  %v10071 = vld [vmem:[%s2 + $0xb70] sm:$0xff]
  %v10072 = vld [vmem:[%s2 + $0xb78] sm:$0xff]
  %v10073 = vld [vmem:[%s2 + $0xb80] sm:$0xff]
  %v10074 = vld [vmem:[%s2 + $0xb88] sm:$0xff]
  %v10075 = vld [vmem:[%s2 + $0xb90] sm:$0xff]
  %v10076 = vld [vmem:[%s2 + $0xb98] sm:$0xff]
  %v10077 = vld [vmem:[%s2 + $0xba0] sm:$0xff]
  %v10078 = vld [vmem:[%s2 + $0xba8] sm:$0xff]
  %v10079 = vld [vmem:[%s2 + $0xbb0] sm:$0xff]
  %v10080 = vld [vmem:[%s2 + $0xbb8] sm:$0xff]
  %v10081 = vld [vmem:[%s2 + $0xbc0] sm:$0xff]
  %v10082 = vld [vmem:[%s2 + $0xbc8] sm:$0xff]
  %v10083 = vld [vmem:[%s2 + $0xbd0] sm:$0xff]
  %v10084 = vld [vmem:[%s2 + $0xbd8] sm:$0xff]
  %v10085 = vld [vmem:[%s2 + $0xbe0] sm:$0xff]
  %v10086 = vld [vmem:[%s2 + $0xbe8] sm:$0xff]
  %v10087 = vld [vmem:[%s2 + $0xbf0] sm:$0xff]
  %v10088 = vld [vmem:[%s2 + $0xbf8] sm:$0xff]
  %v10089 = vld [vmem:[%s2 + $0xc00] sm:$0xff]
  %v10090 = vld [vmem:[%s2 + $0xc08] sm:$0xff]
  %v10091 = vld [vmem:[%s2 + $0xc10] sm:$0xff]
  %v10092 = vld [vmem:[%s2 + $0xc18] sm:$0xff]
  %v10093 = vld [vmem:[%s2 + $0xc20] sm:$0xff]
  %v10094 = vld [vmem:[%s2 + $0xc28] sm:$0xff]
  %v10095 = vld [vmem:[%s2 + $0xc30] sm:$0xff]
  %v10096 = vld [vmem:[%s2 + $0xc38] sm:$0xff]
  %v10097 = vld [vmem:[%s2 + $0xc40] sm:$0xff]
  %v10098 = vld [vmem:[%s2 + $0xc48] sm:$0xff]
  %v10099 = vld [vmem:[%s2 + $0xc50] sm:$0xff]
  %v10100 = vld [vmem:[%s2 + $0xc58] sm:$0xff]
  %v10101 = vld [vmem:[%s2 + $0xc60] sm:$0xff]
  %v10102 = vld [vmem:[%s2 + $0xc68] sm:$0xff]
  %v10103 = vld [vmem:[%s2 + $0xc70] sm:$0xff]
  %v10104 = vld [vmem:[%s2 + $0xc78] sm:$0xff]
  %v10105 = vld [vmem:[%s2 + $0xc80] sm:$0xff]
  %v10106 = vld [vmem:[%s2 + $0xc88] sm:$0xff]
  %v10107 = vld [vmem:[%s2 + $0xc90] sm:$0xff]
  %v10108 = vld [vmem:[%s2 + $0xc98] sm:$0xff]
  %v10109 = vld [vmem:[%s2 + $0xca0] sm:$0xff]
  %v10110 = vld [vmem:[%s2 + $0xca8] sm:$0xff]
  %v10111 = vld [vmem:[%s2 + $0xcb0] sm:$0xff]
  %v10112 = vld [vmem:[%s2 + $0xcb8] sm:$0xff]
  %v10113 = vld [vmem:[%s2 + $0xcc0] sm:$0xff]
  %v10114 = vld [vmem:[%s2 + $0xcc8] sm:$0xff]
  %v10115 = vld [vmem:[%s2 + $0xcd0] sm:$0xff]
  %v10116 = vld [vmem:[%s2 + $0xcd8] sm:$0xff]
  %v10117 = vld [vmem:[%s2 + $0xce0] sm:$0xff]
  %v10118 = vld [vmem:[%s2 + $0xce8] sm:$0xff]
  %v10119 = vld [vmem:[%s2 + $0xcf0] sm:$0xff]
  %v10120 = vld [vmem:[%s2 + $0xcf8] sm:$0xff]
  %v10121 = vld [vmem:[%s2 + $0xd00] sm:$0xff]
  %v10122 = vld [vmem:[%s2 + $0xd08] sm:$0xff]
  %v10123 = vld [vmem:[%s2 + $0xd10] sm:$0xff]
  %v10124 = vld [vmem:[%s2 + $0xd18] sm:$0xff]
  %v10125 = vld [vmem:[%s2 + $0xd20] sm:$0xff]
  %v10126 = vld [vmem:[%s2 + $0xd28] sm:$0xff]
  %v10127 = vld [vmem:[%s2 + $0xd30] sm:$0xff]
  %v10128 = vld [vmem:[%s2 + $0xd38] sm:$0xff]
  %v10129 = vld [vmem:[%s2 + $0xd40] sm:$0xff]
  %v10130 = vld [vmem:[%s2 + $0xd48] sm:$0xff]
  %v10131 = vld [vmem:[%s2 + $0xd50] sm:$0xff]
  %v10132 = vld [vmem:[%s2 + $0xd58] sm:$0xff]
  %v10133 = vld [vmem:[%s2 + $0xd60] sm:$0xff]
  %v10134 = vld [vmem:[%s2 + $0xd68] sm:$0xff]
  %v10135 = vld [vmem:[%s2 + $0xd70] sm:$0xff]
  %v10136 = vld [vmem:[%s2 + $0xd78] sm:$0xff]
  %v10137 = vld [vmem:[%s2 + $0xd80] sm:$0xff]
  %v10138 = vld [vmem:[%s2 + $0xd88] sm:$0xff]
  %v10139 = vld [vmem:[%s2 + $0xd90] sm:$0xff]
  %v10140 = vld [vmem:[%s2 + $0xd98] sm:$0xff]
  %v10141 = vld [vmem:[%s2 + $0xda0] sm:$0xff]
  %v10142 = vld [vmem:[%s2 + $0xda8] sm:$0xff]
  %v10143 = vld [vmem:[%s2 + $0xdb0] sm:$0xff]
  %v10144 = vld [vmem:[%s2 + $0xdb8] sm:$0xff]
  %v10145 = vld [vmem:[%s2 + $0xdc0] sm:$0xff]
  %v10146 = vld [vmem:[%s2 + $0xdc8] sm:$0xff]
  %v10147 = vld [vmem:[%s2 + $0xdd0] sm:$0xff]
  %v10148 = vld [vmem:[%s2 + $0xdd8] sm:$0xff]
  %v10149 = vld [vmem:[%s2 + $0xde0] sm:$0xff]
  %v10150 = vld [vmem:[%s2 + $0xde8] sm:$0xff]
  %v10151 = vld [vmem:[%s2 + $0xdf0] sm:$0xff]
  %v10152 = vld [vmem:[%s2 + $0xdf8] sm:$0xff]
  %v10153 = vld [vmem:[%s2 + $0xe00] sm:$0xff]
  %v10154 = vld [vmem:[%s2 + $0xe08] sm:$0xff]
  %v10155 = vld [vmem:[%s2 + $0xe10] sm:$0xff]
  %v10156 = vld [vmem:[%s2 + $0xe18] sm:$0xff]
  %v10157 = vld [vmem:[%s2 + $0xe20] sm:$0xff]
  %v10158 = vld [vmem:[%s2 + $0xe28] sm:$0xff]
  %v10159 = vld [vmem:[%s2 + $0xe30] sm:$0xff]
  %v10160 = vld [vmem:[%s2 + $0xe38] sm:$0xff]
  %v10161 = vld [vmem:[%s2 + $0xe40] sm:$0xff]
  %v10162 = vld [vmem:[%s2 + $0xe48] sm:$0xff]
  %v10163 = vld [vmem:[%s2 + $0xe50] sm:$0xff]
  %v10164 = vld [vmem:[%s2 + $0xe58] sm:$0xff]
  %v10165 = vld [vmem:[%s2 + $0xe60] sm:$0xff]
  %v10166 = vld [vmem:[%s2 + $0xe68] sm:$0xff]
  %v10167 = vld [vmem:[%s2 + $0xe70] sm:$0xff]
  %v10168 = vld [vmem:[%s2 + $0xe78] sm:$0xff]
  %v10169 = vld [vmem:[%s2 + $0xe80] sm:$0xff]
  %v10170 = vld [vmem:[%s2 + $0xe88] sm:$0xff]
  %v10171 = vld [vmem:[%s2 + $0xe90] sm:$0xff]
  %v10172 = vld [vmem:[%s2 + $0xe98] sm:$0xff]
  %v10173 = vld [vmem:[%s2 + $0xea0] sm:$0xff]
  %v10174 = vld [vmem:[%s2 + $0xea8] sm:$0xff]
  %v10175 = vld [vmem:[%s2 + $0xeb0] sm:$0xff]
  %v10176 = vld [vmem:[%s2 + $0xeb8] sm:$0xff]
  %v10177 = vld [vmem:[%s2 + $0xec0] sm:$0xff]
  %v10178 = vld [vmem:[%s2 + $0xec8] sm:$0xff]
  %v10179 = vld [vmem:[%s2 + $0xed0] sm:$0xff]
  %v10180 = vld [vmem:[%s2 + $0xed8] sm:$0xff]
  %v10181 = vld [vmem:[%s2 + $0xee0] sm:$0xff]
  %v10182 = vld [vmem:[%s2 + $0xee8] sm:$0xff]
  %v10183 = vld [vmem:[%s2 + $0xef0] sm:$0xff]
  %v10184 = vld [vmem:[%s2 + $0xef8] sm:$0xff]
  %v10185 = vld [vmem:[%s2 + $0xf00] sm:$0xff]
  %v10186 = vld [vmem:[%s2 + $0xf08] sm:$0xff]
  %v10187 = vld [vmem:[%s2 + $0xf10] sm:$0xff]
  %v10188 = vld [vmem:[%s2 + $0xf18] sm:$0xff]
  %v10189 = vld [vmem:[%s2 + $0xf20] sm:$0xff]
  %v10190 = vld [vmem:[%s2 + $0xf28] sm:$0xff]
  %v10191 = vld [vmem:[%s2 + $0xf30] sm:$0xff]
  %v10192 = vld [vmem:[%s2 + $0xf38] sm:$0xff]
  %v10193 = vld [vmem:[%s2 + $0xf40] sm:$0xff]
  %v10194 = vld [vmem:[%s2 + $0xf48] sm:$0xff]
  %v10195 = vld [vmem:[%s2 + $0xf50] sm:$0xff]
  %v10196 = vld [vmem:[%s2 + $0xf58] sm:$0xff]
  %v10197 = vld [vmem:[%s2 + $0xf60] sm:$0xff]
  %v10198 = vld [vmem:[%s2 + $0xf68] sm:$0xff]
  %v10199 = vld [vmem:[%s2 + $0xf70] sm:$0xff]
  %v10200 = vld [vmem:[%s2 + $0xf78] sm:$0xff]
  %v10201 = vld [vmem:[%s2 + $0xf80] sm:$0xff]
  %v10202 = vld [vmem:[%s2 + $0xf88] sm:$0xff]
  %v10203 = vld [vmem:[%s2 + $0xf90] sm:$0xff]
  %v10204 = vld [vmem:[%s2 + $0xf98] sm:$0xff]
  %v10205 = vld [vmem:[%s2 + $0xfa0] sm:$0xff]
  %v10206 = vld [vmem:[%s2 + $0xfa8] sm:$0xff]
  %v10207 = vld [vmem:[%s2 + $0xfb0] sm:$0xff]
  %v10208 = vld [vmem:[%s2 + $0xfb8] sm:$0xff]
  %v10209 = vld [vmem:[%s2 + $0xfc0] sm:$0xff]
  %v10210 = vld [vmem:[%s2 + $0xfc8] sm:$0xff]
  %v10211 = vld [vmem:[%s2 + $0xfd0] sm:$0xff]
  %v10212 = vld [vmem:[%s2 + $0xfd8] sm:$0xff]
  %v10213 = vld [vmem:[%s2 + $0xfe0] sm:$0xff]
  %v10214 = vld [vmem:[%s2 + $0xfe8] sm:$0xff]
  %v10215 = vld [vmem:[%s2 + $0xff0] sm:$0xff]
  %v10216 = vld [vmem:[%s2 + $0xff8] sm:$0xff]
  %10217 = vmatpush.msra.mxu0 %v9825
  %10218 = vmatpush.msra.mxu0 %v9817
  %10219 = vmatpush.msra.mxu0 %v9809
  %10220 = vmatpush.msra.mxu0 %v9801
  %10221 = vmatpush.msra.mxu0 %v9793
  %10222 = vmatpush.msra.mxu0 %v9785
  %10223 = vmatpush.msra.mxu0 %v9777
  %10224 = vmatpush.msra.mxu0 %v9769
  %10225 = vmatpush.msra.mxu0 %v9761
  %10226 = vmatpush.msra.mxu0 %v9753
  %10227 = vmatpush.msra.mxu0 %v9745
  %10228 = vmatpush.msra.mxu0 %v9737
  %10229 = vmatpush.msra.mxu0 %v9729
  %10230 = vmatpush.msra.mxu0 %v9721
  %10231 = vmatpush.msra.mxu0 %v9713
  %10232 = vmatpush.msra.mxu0 %v9705
  %10233 = vmatmul.f32.gmra.mxu0 %v9692
  %v10234 = vpop.f32.mrf.mxu0
  %v10235 = vadd.f32 0.0, %v10234
  %10236 = vdwg.mxu0
  %10237 = vmatpush.msra.mxu0 %v9953
  %10238 = vmatpush.msra.mxu0 %v9945
  %10239 = vmatpush.msra.mxu0 %v9937
  %10240 = vmatpush.msra.mxu0 %v9929
  %10241 = vmatpush.msra.mxu0 %v9921
  %10242 = vmatpush.msra.mxu0 %v9913
  %10243 = vmatpush.msra.mxu0 %v9905
  %10244 = vmatpush.msra.mxu0 %v9897
  %10245 = vmatpush.msra.mxu0 %v9889
  %10246 = vmatpush.msra.mxu0 %v9881
  %10247 = vmatpush.msra.mxu0 %v9873
  %10248 = vmatpush.msra.mxu0 %v9865
  %10249 = vmatpush.msra.mxu0 %v9857
  %10250 = vmatpush.msra.mxu0 %v9849
  %10251 = vmatpush.msra.mxu0 %v9841
  %10252 = vmatpush.msra.mxu0 %v9833
  %10253 = vmatmul.f32.gmra.mxu0 %v9693
  %v10254 = vpop.f32.mrf.mxu0
  %v10255 = vadd.f32 %v10235, %v10254
  %10256 = vdwg.mxu0
  %10257 = vmatpush.msra.mxu0 %v10081
  %10258 = vmatpush.msra.mxu0 %v10073
  %10259 = vmatpush.msra.mxu0 %v10065
  %10260 = vmatpush.msra.mxu0 %v10057
  %10261 = vmatpush.msra.mxu0 %v10049
  %10262 = vmatpush.msra.mxu0 %v10041
  %10263 = vmatpush.msra.mxu0 %v10033
  %10264 = vmatpush.msra.mxu0 %v10025
  %10265 = vmatpush.msra.mxu0 %v10017
  %10266 = vmatpush.msra.mxu0 %v10009
  %10267 = vmatpush.msra.mxu0 %v10001
  %10268 = vmatpush.msra.mxu0 %v9993
  %10269 = vmatpush.msra.mxu0 %v9985
  %10270 = vmatpush.msra.mxu0 %v9977
  %10271 = vmatpush.msra.mxu0 %v9969
  %10272 = vmatpush.msra.mxu0 %v9961
  %10273 = vmatmul.f32.gmra.mxu0 %v9694
  %v10274 = vpop.f32.mrf.mxu0
  %v10275 = vadd.f32 %v10255, %v10274
  %10276 = vdwg.mxu0
  %10277 = vmatpush.msra.mxu0 %v10209
  %10278 = vmatpush.msra.mxu0 %v10201
  %10279 = vmatpush.msra.mxu0 %v10193
  %10280 = vmatpush.msra.mxu0 %v10185
  %10281 = vmatpush.msra.mxu0 %v10177
  %10282 = vmatpush.msra.mxu0 %v10169
  %10283 = vmatpush.msra.mxu0 %v10161
  %10284 = vmatpush.msra.mxu0 %v10153
  %10285 = vmatpush.msra.mxu0 %v10145
  %10286 = vmatpush.msra.mxu0 %v10137
  %10287 = vmatpush.msra.mxu0 %v10129
  %10288 = vmatpush.msra.mxu0 %v10121
  %10289 = vmatpush.msra.mxu0 %v10113
  %10290 = vmatpush.msra.mxu0 %v10105
  %10291 = vmatpush.msra.mxu0 %v10097
  %10292 = vmatpush.msra.mxu0 %v10089
  %10293 = vmatmul.f32.gmra.mxu0 %v9695
  %v10294 = vpop.f32.mrf.mxu0
  %v10295 = vadd.f32 %v10275, %v10294
  %10296 = vdwg.mxu0
  %10297 = vmatpush.msra.mxu0 %v9826
  %10298 = vmatpush.msra.mxu0 %v9818
  %10299 = vmatpush.msra.mxu0 %v9810
  %10300 = vmatpush.msra.mxu0 %v9802
  %10301 = vmatpush.msra.mxu0 %v9794
  %10302 = vmatpush.msra.mxu0 %v9786
  %10303 = vmatpush.msra.mxu0 %v9778
  %10304 = vmatpush.msra.mxu0 %v9770
  %10305 = vmatpush.msra.mxu0 %v9762
  %10306 = vmatpush.msra.mxu0 %v9754
  %10307 = vmatpush.msra.mxu0 %v9746
  %10308 = vmatpush.msra.mxu0 %v9738
  %10309 = vmatpush.msra.mxu0 %v9730
  %10310 = vmatpush.msra.mxu0 %v9722
  %10311 = vmatpush.msra.mxu0 %v9714
  %10312 = vmatpush.msra.mxu0 %v9706
  %10313 = vmatmul.f32.gmra.mxu0 %v9692
  %v10314 = vpop.f32.mrf.mxu0
  %v10315 = vadd.f32 0.0, %v10314
  %10316 = vdwg.mxu0
  %10317 = vmatpush.msra.mxu0 %v9954
  %10318 = vmatpush.msra.mxu0 %v9946
  %10319 = vmatpush.msra.mxu0 %v9938
  %10320 = vmatpush.msra.mxu0 %v9930
  %10321 = vmatpush.msra.mxu0 %v9922
  %10322 = vmatpush.msra.mxu0 %v9914
  %10323 = vmatpush.msra.mxu0 %v9906
  %10324 = vmatpush.msra.mxu0 %v9898
  %10325 = vmatpush.msra.mxu0 %v9890
  %10326 = vmatpush.msra.mxu0 %v9882
  %10327 = vmatpush.msra.mxu0 %v9874
  %10328 = vmatpush.msra.mxu0 %v9866
  %10329 = vmatpush.msra.mxu0 %v9858
  %10330 = vmatpush.msra.mxu0 %v9850
  %10331 = vmatpush.msra.mxu0 %v9842
  %10332 = vmatpush.msra.mxu0 %v9834
  %10333 = vmatmul.f32.gmra.mxu0 %v9693
  %v10334 = vpop.f32.mrf.mxu0
  %v10335 = vadd.f32 %v10315, %v10334
  %10336 = vdwg.mxu0
  %10337 = vmatpush.msra.mxu0 %v10082
  %10338 = vmatpush.msra.mxu0 %v10074
  %10339 = vmatpush.msra.mxu0 %v10066
  %10340 = vmatpush.msra.mxu0 %v10058
  %10341 = vmatpush.msra.mxu0 %v10050
  %10342 = vmatpush.msra.mxu0 %v10042
  %10343 = vmatpush.msra.mxu0 %v10034
  %10344 = vmatpush.msra.mxu0 %v10026
  %10345 = vmatpush.msra.mxu0 %v10018
  %10346 = vmatpush.msra.mxu0 %v10010
  %10347 = vmatpush.msra.mxu0 %v10002
  %10348 = vmatpush.msra.mxu0 %v9994
  %10349 = vmatpush.msra.mxu0 %v9986
  %10350 = vmatpush.msra.mxu0 %v9978
  %10351 = vmatpush.msra.mxu0 %v9970
  %10352 = vmatpush.msra.mxu0 %v9962
  %10353 = vmatmul.f32.gmra.mxu0 %v9694
  %v10354 = vpop.f32.mrf.mxu0
  %v10355 = vadd.f32 %v10335, %v10354
  %10356 = vdwg.mxu0
  %10357 = vmatpush.msra.mxu0 %v10210
  %10358 = vmatpush.msra.mxu0 %v10202
  %10359 = vmatpush.msra.mxu0 %v10194
  %10360 = vmatpush.msra.mxu0 %v10186
  %10361 = vmatpush.msra.mxu0 %v10178
  %10362 = vmatpush.msra.mxu0 %v10170
  %10363 = vmatpush.msra.mxu0 %v10162
  %10364 = vmatpush.msra.mxu0 %v10154
  %10365 = vmatpush.msra.mxu0 %v10146
  %10366 = vmatpush.msra.mxu0 %v10138
  %10367 = vmatpush.msra.mxu0 %v10130
  %10368 = vmatpush.msra.mxu0 %v10122
  %10369 = vmatpush.msra.mxu0 %v10114
  %10370 = vmatpush.msra.mxu0 %v10106
  %10371 = vmatpush.msra.mxu0 %v10098
  %10372 = vmatpush.msra.mxu0 %v10090
  %10373 = vmatmul.f32.gmra.mxu0 %v9695
  %v10374 = vpop.f32.mrf.mxu0
  %v10375 = vadd.f32 %v10355, %v10374
  %10376 = vdwg.mxu0
  %10377 = vmatpush.msra.mxu0 %v9827
  %10378 = vmatpush.msra.mxu0 %v9819
  %10379 = vmatpush.msra.mxu0 %v9811
  %10380 = vmatpush.msra.mxu0 %v9803
  %10381 = vmatpush.msra.mxu0 %v9795
  %10382 = vmatpush.msra.mxu0 %v9787
  %10383 = vmatpush.msra.mxu0 %v9779
  %10384 = vmatpush.msra.mxu0 %v9771
  %10385 = vmatpush.msra.mxu0 %v9763
  %10386 = vmatpush.msra.mxu0 %v9755
  %10387 = vmatpush.msra.mxu0 %v9747
  %10388 = vmatpush.msra.mxu0 %v9739
  %10389 = vmatpush.msra.mxu0 %v9731
  %10390 = vmatpush.msra.mxu0 %v9723
  %10391 = vmatpush.msra.mxu0 %v9715
  %10392 = vmatpush.msra.mxu0 %v9707
  %10393 = vmatmul.f32.gmra.mxu0 %v9692
  %v10394 = vpop.f32.mrf.mxu0
  %v10395 = vadd.f32 0.0, %v10394
  %10396 = vdwg.mxu0
  %10397 = vmatpush.msra.mxu0 %v9955
  %10398 = vmatpush.msra.mxu0 %v9947
  %10399 = vmatpush.msra.mxu0 %v9939
  %10400 = vmatpush.msra.mxu0 %v9931
  %10401 = vmatpush.msra.mxu0 %v9923
  %10402 = vmatpush.msra.mxu0 %v9915
  %10403 = vmatpush.msra.mxu0 %v9907
  %10404 = vmatpush.msra.mxu0 %v9899
  %10405 = vmatpush.msra.mxu0 %v9891
  %10406 = vmatpush.msra.mxu0 %v9883
  %10407 = vmatpush.msra.mxu0 %v9875
  %10408 = vmatpush.msra.mxu0 %v9867
  %10409 = vmatpush.msra.mxu0 %v9859
  %10410 = vmatpush.msra.mxu0 %v9851
  %10411 = vmatpush.msra.mxu0 %v9843
  %10412 = vmatpush.msra.mxu0 %v9835
  %10413 = vmatmul.f32.gmra.mxu0 %v9693
  %v10414 = vpop.f32.mrf.mxu0
  %v10415 = vadd.f32 %v10395, %v10414
  %10416 = vdwg.mxu0
  %10417 = vmatpush.msra.mxu0 %v10083
  %10418 = vmatpush.msra.mxu0 %v10075
  %10419 = vmatpush.msra.mxu0 %v10067
  %10420 = vmatpush.msra.mxu0 %v10059
  %10421 = vmatpush.msra.mxu0 %v10051
  %10422 = vmatpush.msra.mxu0 %v10043
  %10423 = vmatpush.msra.mxu0 %v10035
  %10424 = vmatpush.msra.mxu0 %v10027
  %10425 = vmatpush.msra.mxu0 %v10019
  %10426 = vmatpush.msra.mxu0 %v10011
  %10427 = vmatpush.msra.mxu0 %v10003
  %10428 = vmatpush.msra.mxu0 %v9995
  %10429 = vmatpush.msra.mxu0 %v9987
  %10430 = vmatpush.msra.mxu0 %v9979
  %10431 = vmatpush.msra.mxu0 %v9971
  %10432 = vmatpush.msra.mxu0 %v9963
  %10433 = vmatmul.f32.gmra.mxu0 %v9694
  %v10434 = vpop.f32.mrf.mxu0
  %v10435 = vadd.f32 %v10415, %v10434
  %10436 = vdwg.mxu0
  %10437 = vmatpush.msra.mxu0 %v10211
  %10438 = vmatpush.msra.mxu0 %v10203
  %10439 = vmatpush.msra.mxu0 %v10195
  %10440 = vmatpush.msra.mxu0 %v10187
  %10441 = vmatpush.msra.mxu0 %v10179
  %10442 = vmatpush.msra.mxu0 %v10171
  %10443 = vmatpush.msra.mxu0 %v10163
  %10444 = vmatpush.msra.mxu0 %v10155
  %10445 = vmatpush.msra.mxu0 %v10147
  %10446 = vmatpush.msra.mxu0 %v10139
  %10447 = vmatpush.msra.mxu0 %v10131
  %10448 = vmatpush.msra.mxu0 %v10123
  %10449 = vmatpush.msra.mxu0 %v10115
  %10450 = vmatpush.msra.mxu0 %v10107
  %10451 = vmatpush.msra.mxu0 %v10099
  %10452 = vmatpush.msra.mxu0 %v10091
  %10453 = vmatmul.f32.gmra.mxu0 %v9695
  %v10454 = vpop.f32.mrf.mxu0
  %v10455 = vadd.f32 %v10435, %v10454
  %10456 = vdwg.mxu0
  %10457 = vmatpush.msra.mxu0 %v9828
  %10458 = vmatpush.msra.mxu0 %v9820
  %10459 = vmatpush.msra.mxu0 %v9812
  %10460 = vmatpush.msra.mxu0 %v9804
  %10461 = vmatpush.msra.mxu0 %v9796
  %10462 = vmatpush.msra.mxu0 %v9788
  %10463 = vmatpush.msra.mxu0 %v9780
  %10464 = vmatpush.msra.mxu0 %v9772
  %10465 = vmatpush.msra.mxu0 %v9764
  %10466 = vmatpush.msra.mxu0 %v9756
  %10467 = vmatpush.msra.mxu0 %v9748
  %10468 = vmatpush.msra.mxu0 %v9740
  %10469 = vmatpush.msra.mxu0 %v9732
  %10470 = vmatpush.msra.mxu0 %v9724
  %10471 = vmatpush.msra.mxu0 %v9716
  %10472 = vmatpush.msra.mxu0 %v9708
  %10473 = vmatmul.f32.gmra.mxu0 %v9692
  %v10474 = vpop.f32.mrf.mxu0
  %v10475 = vadd.f32 0.0, %v10474
  %10476 = vdwg.mxu0
  %10477 = vmatpush.msra.mxu0 %v9956
  %10478 = vmatpush.msra.mxu0 %v9948
  %10479 = vmatpush.msra.mxu0 %v9940
  %10480 = vmatpush.msra.mxu0 %v9932
  %10481 = vmatpush.msra.mxu0 %v9924
  %10482 = vmatpush.msra.mxu0 %v9916
  %10483 = vmatpush.msra.mxu0 %v9908
  %10484 = vmatpush.msra.mxu0 %v9900
  %10485 = vmatpush.msra.mxu0 %v9892
  %10486 = vmatpush.msra.mxu0 %v9884
  %10487 = vmatpush.msra.mxu0 %v9876
  %10488 = vmatpush.msra.mxu0 %v9868
  %10489 = vmatpush.msra.mxu0 %v9860
  %10490 = vmatpush.msra.mxu0 %v9852
  %10491 = vmatpush.msra.mxu0 %v9844
  %10492 = vmatpush.msra.mxu0 %v9836
  %10493 = vmatmul.f32.gmra.mxu0 %v9693
  %v10494 = vpop.f32.mrf.mxu0
  %v10495 = vadd.f32 %v10475, %v10494
  %10496 = vdwg.mxu0
  %10497 = vmatpush.msra.mxu0 %v10084
  %10498 = vmatpush.msra.mxu0 %v10076
  %10499 = vmatpush.msra.mxu0 %v10068
  %10500 = vmatpush.msra.mxu0 %v10060
  %10501 = vmatpush.msra.mxu0 %v10052
  %10502 = vmatpush.msra.mxu0 %v10044
  %10503 = vmatpush.msra.mxu0 %v10036
  %10504 = vmatpush.msra.mxu0 %v10028
  %10505 = vmatpush.msra.mxu0 %v10020
  %10506 = vmatpush.msra.mxu0 %v10012
  %10507 = vmatpush.msra.mxu0 %v10004
  %10508 = vmatpush.msra.mxu0 %v9996
  %10509 = vmatpush.msra.mxu0 %v9988
  %10510 = vmatpush.msra.mxu0 %v9980
  %10511 = vmatpush.msra.mxu0 %v9972
  %10512 = vmatpush.msra.mxu0 %v9964
  %10513 = vmatmul.f32.gmra.mxu0 %v9694
  %v10514 = vpop.f32.mrf.mxu0
  %v10515 = vadd.f32 %v10495, %v10514
  %10516 = vdwg.mxu0
  %10517 = vmatpush.msra.mxu0 %v10212
  %10518 = vmatpush.msra.mxu0 %v10204
  %10519 = vmatpush.msra.mxu0 %v10196
  %10520 = vmatpush.msra.mxu0 %v10188
  %10521 = vmatpush.msra.mxu0 %v10180
  %10522 = vmatpush.msra.mxu0 %v10172
  %10523 = vmatpush.msra.mxu0 %v10164
  %10524 = vmatpush.msra.mxu0 %v10156
  %10525 = vmatpush.msra.mxu0 %v10148
  %10526 = vmatpush.msra.mxu0 %v10140
  %10527 = vmatpush.msra.mxu0 %v10132
  %10528 = vmatpush.msra.mxu0 %v10124
  %10529 = vmatpush.msra.mxu0 %v10116
  %10530 = vmatpush.msra.mxu0 %v10108
  %10531 = vmatpush.msra.mxu0 %v10100
  %10532 = vmatpush.msra.mxu0 %v10092
  %10533 = vmatmul.f32.gmra.mxu0 %v9695
  %v10534 = vpop.f32.mrf.mxu0
  %v10535 = vadd.f32 %v10515, %v10534
  %10536 = vdwg.mxu0
  %10537 = vmatpush.msra.mxu0 %v9829
  %10538 = vmatpush.msra.mxu0 %v9821
  %10539 = vmatpush.msra.mxu0 %v9813
  %10540 = vmatpush.msra.mxu0 %v9805
  %10541 = vmatpush.msra.mxu0 %v9797
  %10542 = vmatpush.msra.mxu0 %v9789
  %10543 = vmatpush.msra.mxu0 %v9781
  %10544 = vmatpush.msra.mxu0 %v9773
  %10545 = vmatpush.msra.mxu0 %v9765
  %10546 = vmatpush.msra.mxu0 %v9757
  %10547 = vmatpush.msra.mxu0 %v9749
  %10548 = vmatpush.msra.mxu0 %v9741
  %10549 = vmatpush.msra.mxu0 %v9733
  %10550 = vmatpush.msra.mxu0 %v9725
  %10551 = vmatpush.msra.mxu0 %v9717
  %10552 = vmatpush.msra.mxu0 %v9709
  %10553 = vmatmul.f32.gmra.mxu0 %v9692
  %v10554 = vpop.f32.mrf.mxu0
  %v10555 = vadd.f32 0.0, %v10554
  %10556 = vdwg.mxu0
  %10557 = vmatpush.msra.mxu0 %v9957
  %10558 = vmatpush.msra.mxu0 %v9949
  %10559 = vmatpush.msra.mxu0 %v9941
  %10560 = vmatpush.msra.mxu0 %v9933
  %10561 = vmatpush.msra.mxu0 %v9925
  %10562 = vmatpush.msra.mxu0 %v9917
  %10563 = vmatpush.msra.mxu0 %v9909
  %10564 = vmatpush.msra.mxu0 %v9901
  %10565 = vmatpush.msra.mxu0 %v9893
  %10566 = vmatpush.msra.mxu0 %v9885
  %10567 = vmatpush.msra.mxu0 %v9877
  %10568 = vmatpush.msra.mxu0 %v9869
  %10569 = vmatpush.msra.mxu0 %v9861
  %10570 = vmatpush.msra.mxu0 %v9853
  %10571 = vmatpush.msra.mxu0 %v9845
  %10572 = vmatpush.msra.mxu0 %v9837
  %10573 = vmatmul.f32.gmra.mxu0 %v9693
  %v10574 = vpop.f32.mrf.mxu0
  %v10575 = vadd.f32 %v10555, %v10574
  %10576 = vdwg.mxu0
  %10577 = vmatpush.msra.mxu0 %v10085
  %10578 = vmatpush.msra.mxu0 %v10077
  %10579 = vmatpush.msra.mxu0 %v10069
  %10580 = vmatpush.msra.mxu0 %v10061
  %10581 = vmatpush.msra.mxu0 %v10053
  %10582 = vmatpush.msra.mxu0 %v10045
  %10583 = vmatpush.msra.mxu0 %v10037
  %10584 = vmatpush.msra.mxu0 %v10029
  %10585 = vmatpush.msra.mxu0 %v10021
  %10586 = vmatpush.msra.mxu0 %v10013
  %10587 = vmatpush.msra.mxu0 %v10005
  %10588 = vmatpush.msra.mxu0 %v9997
  %10589 = vmatpush.msra.mxu0 %v9989
  %10590 = vmatpush.msra.mxu0 %v9981
  %10591 = vmatpush.msra.mxu0 %v9973
  %10592 = vmatpush.msra.mxu0 %v9965
  %10593 = vmatmul.f32.gmra.mxu0 %v9694
  %v10594 = vpop.f32.mrf.mxu0
  %v10595 = vadd.f32 %v10575, %v10594
  %10596 = vdwg.mxu0
  %10597 = vmatpush.msra.mxu0 %v10213
  %10598 = vmatpush.msra.mxu0 %v10205
  %10599 = vmatpush.msra.mxu0 %v10197
  %10600 = vmatpush.msra.mxu0 %v10189
  %10601 = vmatpush.msra.mxu0 %v10181
  %10602 = vmatpush.msra.mxu0 %v10173
  %10603 = vmatpush.msra.mxu0 %v10165
  %10604 = vmatpush.msra.mxu0 %v10157
  %10605 = vmatpush.msra.mxu0 %v10149
  %10606 = vmatpush.msra.mxu0 %v10141
  %10607 = vmatpush.msra.mxu0 %v10133
  %10608 = vmatpush.msra.mxu0 %v10125
  %10609 = vmatpush.msra.mxu0 %v10117
  %10610 = vmatpush.msra.mxu0 %v10109
  %10611 = vmatpush.msra.mxu0 %v10101
  %10612 = vmatpush.msra.mxu0 %v10093
  %10613 = vmatmul.f32.gmra.mxu0 %v9695
  %v10614 = vpop.f32.mrf.mxu0
  %v10615 = vadd.f32 %v10595, %v10614
  %10616 = vdwg.mxu0
  %10617 = vmatpush.msra.mxu0 %v9830
  %10618 = vmatpush.msra.mxu0 %v9822
  %10619 = vmatpush.msra.mxu0 %v9814
  %10620 = vmatpush.msra.mxu0 %v9806
  %10621 = vmatpush.msra.mxu0 %v9798
  %10622 = vmatpush.msra.mxu0 %v9790
  %10623 = vmatpush.msra.mxu0 %v9782
  %10624 = vmatpush.msra.mxu0 %v9774
  %10625 = vmatpush.msra.mxu0 %v9766
  %10626 = vmatpush.msra.mxu0 %v9758
  %10627 = vmatpush.msra.mxu0 %v9750
  %10628 = vmatpush.msra.mxu0 %v9742
  %10629 = vmatpush.msra.mxu0 %v9734
  %10630 = vmatpush.msra.mxu0 %v9726
  %10631 = vmatpush.msra.mxu0 %v9718
  %10632 = vmatpush.msra.mxu0 %v9710
  %10633 = vmatmul.f32.gmra.mxu0 %v9692
  %v10634 = vpop.f32.mrf.mxu0
  %v10635 = vadd.f32 0.0, %v10634
  %10636 = vdwg.mxu0
  %10637 = vmatpush.msra.mxu0 %v9958
  %10638 = vmatpush.msra.mxu0 %v9950
  %10639 = vmatpush.msra.mxu0 %v9942
  %10640 = vmatpush.msra.mxu0 %v9934
  %10641 = vmatpush.msra.mxu0 %v9926
  %10642 = vmatpush.msra.mxu0 %v9918
  %10643 = vmatpush.msra.mxu0 %v9910
  %10644 = vmatpush.msra.mxu0 %v9902
  %10645 = vmatpush.msra.mxu0 %v9894
  %10646 = vmatpush.msra.mxu0 %v9886
  %10647 = vmatpush.msra.mxu0 %v9878
  %10648 = vmatpush.msra.mxu0 %v9870
  %10649 = vmatpush.msra.mxu0 %v9862
  %10650 = vmatpush.msra.mxu0 %v9854
  %10651 = vmatpush.msra.mxu0 %v9846
  %10652 = vmatpush.msra.mxu0 %v9838
  %10653 = vmatmul.f32.gmra.mxu0 %v9693
  %v10654 = vpop.f32.mrf.mxu0
  %v10655 = vadd.f32 %v10635, %v10654
  %10656 = vdwg.mxu0
  %10657 = vmatpush.msra.mxu0 %v10086
  %10658 = vmatpush.msra.mxu0 %v10078
  %10659 = vmatpush.msra.mxu0 %v10070
  %10660 = vmatpush.msra.mxu0 %v10062
  %10661 = vmatpush.msra.mxu0 %v10054
  %10662 = vmatpush.msra.mxu0 %v10046
  %10663 = vmatpush.msra.mxu0 %v10038
  %10664 = vmatpush.msra.mxu0 %v10030
  %10665 = vmatpush.msra.mxu0 %v10022
  %10666 = vmatpush.msra.mxu0 %v10014
  %10667 = vmatpush.msra.mxu0 %v10006
  %10668 = vmatpush.msra.mxu0 %v9998
  %10669 = vmatpush.msra.mxu0 %v9990
  %10670 = vmatpush.msra.mxu0 %v9982
  %10671 = vmatpush.msra.mxu0 %v9974
  %10672 = vmatpush.msra.mxu0 %v9966
  %10673 = vmatmul.f32.gmra.mxu0 %v9694
  %v10674 = vpop.f32.mrf.mxu0
  %v10675 = vadd.f32 %v10655, %v10674
  %10676 = vdwg.mxu0
  %10677 = vmatpush.msra.mxu0 %v10214
  %10678 = vmatpush.msra.mxu0 %v10206
  %10679 = vmatpush.msra.mxu0 %v10198
  %10680 = vmatpush.msra.mxu0 %v10190
  %10681 = vmatpush.msra.mxu0 %v10182
  %10682 = vmatpush.msra.mxu0 %v10174
  %10683 = vmatpush.msra.mxu0 %v10166
  %10684 = vmatpush.msra.mxu0 %v10158
  %10685 = vmatpush.msra.mxu0 %v10150
  %10686 = vmatpush.msra.mxu0 %v10142
  %10687 = vmatpush.msra.mxu0 %v10134
  %10688 = vmatpush.msra.mxu0 %v10126
  %10689 = vmatpush.msra.mxu0 %v10118
  %10690 = vmatpush.msra.mxu0 %v10110
  %10691 = vmatpush.msra.mxu0 %v10102
  %10692 = vmatpush.msra.mxu0 %v10094
  %10693 = vmatmul.f32.gmra.mxu0 %v9695
  %v10694 = vpop.f32.mrf.mxu0
  %v10695 = vadd.f32 %v10675, %v10694
  %10696 = vdwg.mxu0
  %10697 = vmatpush.msra.mxu0 %v9831
  %10698 = vmatpush.msra.mxu0 %v9823
  %10699 = vmatpush.msra.mxu0 %v9815
  %10700 = vmatpush.msra.mxu0 %v9807
  %10701 = vmatpush.msra.mxu0 %v9799
  %10702 = vmatpush.msra.mxu0 %v9791
  %10703 = vmatpush.msra.mxu0 %v9783
  %10704 = vmatpush.msra.mxu0 %v9775
  %10705 = vmatpush.msra.mxu0 %v9767
  %10706 = vmatpush.msra.mxu0 %v9759
  %10707 = vmatpush.msra.mxu0 %v9751
  %10708 = vmatpush.msra.mxu0 %v9743
  %10709 = vmatpush.msra.mxu0 %v9735
  %10710 = vmatpush.msra.mxu0 %v9727
  %10711 = vmatpush.msra.mxu0 %v9719
  %10712 = vmatpush.msra.mxu0 %v9711
  %10713 = vmatmul.f32.gmra.mxu0 %v9692
  %v10714 = vpop.f32.mrf.mxu0
  %v10715 = vadd.f32 0.0, %v10714
  %10716 = vdwg.mxu0
  %10717 = vmatpush.msra.mxu0 %v9959
  %10718 = vmatpush.msra.mxu0 %v9951
  %10719 = vmatpush.msra.mxu0 %v9943
  %10720 = vmatpush.msra.mxu0 %v9935
  %10721 = vmatpush.msra.mxu0 %v9927
  %10722 = vmatpush.msra.mxu0 %v9919
  %10723 = vmatpush.msra.mxu0 %v9911
  %10724 = vmatpush.msra.mxu0 %v9903
  %10725 = vmatpush.msra.mxu0 %v9895
  %10726 = vmatpush.msra.mxu0 %v9887
  %10727 = vmatpush.msra.mxu0 %v9879
  %10728 = vmatpush.msra.mxu0 %v9871
  %10729 = vmatpush.msra.mxu0 %v9863
  %10730 = vmatpush.msra.mxu0 %v9855
  %10731 = vmatpush.msra.mxu0 %v9847
  %10732 = vmatpush.msra.mxu0 %v9839
  %10733 = vmatmul.f32.gmra.mxu0 %v9693
  %v10734 = vpop.f32.mrf.mxu0
  %v10735 = vadd.f32 %v10715, %v10734
  %10736 = vdwg.mxu0
  %10737 = vmatpush.msra.mxu0 %v10087
  %10738 = vmatpush.msra.mxu0 %v10079
  %10739 = vmatpush.msra.mxu0 %v10071
  %10740 = vmatpush.msra.mxu0 %v10063
  %10741 = vmatpush.msra.mxu0 %v10055
  %10742 = vmatpush.msra.mxu0 %v10047
  %10743 = vmatpush.msra.mxu0 %v10039
  %10744 = vmatpush.msra.mxu0 %v10031
  %10745 = vmatpush.msra.mxu0 %v10023
  %10746 = vmatpush.msra.mxu0 %v10015
  %10747 = vmatpush.msra.mxu0 %v10007
  %10748 = vmatpush.msra.mxu0 %v9999
  %10749 = vmatpush.msra.mxu0 %v9991
  %10750 = vmatpush.msra.mxu0 %v9983
  %10751 = vmatpush.msra.mxu0 %v9975
  %10752 = vmatpush.msra.mxu0 %v9967
  %10753 = vmatmul.f32.gmra.mxu0 %v9694
  %v10754 = vpop.f32.mrf.mxu0
  %v10755 = vadd.f32 %v10735, %v10754
  %10756 = vdwg.mxu0
  %10757 = vmatpush.msra.mxu0 %v10215
  %10758 = vmatpush.msra.mxu0 %v10207
  %10759 = vmatpush.msra.mxu0 %v10199
  %10760 = vmatpush.msra.mxu0 %v10191
  %10761 = vmatpush.msra.mxu0 %v10183
  %10762 = vmatpush.msra.mxu0 %v10175
  %10763 = vmatpush.msra.mxu0 %v10167
  %10764 = vmatpush.msra.mxu0 %v10159
  %10765 = vmatpush.msra.mxu0 %v10151
  %10766 = vmatpush.msra.mxu0 %v10143
  %10767 = vmatpush.msra.mxu0 %v10135
  %10768 = vmatpush.msra.mxu0 %v10127
  %10769 = vmatpush.msra.mxu0 %v10119
  %10770 = vmatpush.msra.mxu0 %v10111
  %10771 = vmatpush.msra.mxu0 %v10103
  %10772 = vmatpush.msra.mxu0 %v10095
  %10773 = vmatmul.f32.gmra.mxu0 %v9695
  %v10774 = vpop.f32.mrf.mxu0
  %v10775 = vadd.f32 %v10755, %v10774
  %10776 = vdwg.mxu0
  %10777 = vmatpush.msra.mxu0 %v9832
  %10778 = vmatpush.msra.mxu0 %v9824
  %10779 = vmatpush.msra.mxu0 %v9816
  %10780 = vmatpush.msra.mxu0 %v9808
  %10781 = vmatpush.msra.mxu0 %v9800
  %10782 = vmatpush.msra.mxu0 %v9792
  %10783 = vmatpush.msra.mxu0 %v9784
  %10784 = vmatpush.msra.mxu0 %v9776
  %10785 = vmatpush.msra.mxu0 %v9768
  %10786 = vmatpush.msra.mxu0 %v9760
  %10787 = vmatpush.msra.mxu0 %v9752
  %10788 = vmatpush.msra.mxu0 %v9744
  %10789 = vmatpush.msra.mxu0 %v9736
  %10790 = vmatpush.msra.mxu0 %v9728
  %10791 = vmatpush.msra.mxu0 %v9720
  %10792 = vmatpush.msra.mxu0 %v9712
  %10793 = vmatmul.f32.gmra.mxu0 %v9692
  %v10794 = vpop.f32.mrf.mxu0
  %v10795 = vadd.f32 0.0, %v10794
  %10796 = vdwg.mxu0
  %10797 = vmatpush.msra.mxu0 %v9960
  %10798 = vmatpush.msra.mxu0 %v9952
  %10799 = vmatpush.msra.mxu0 %v9944
  %10800 = vmatpush.msra.mxu0 %v9936
  %10801 = vmatpush.msra.mxu0 %v9928
  %10802 = vmatpush.msra.mxu0 %v9920
  %10803 = vmatpush.msra.mxu0 %v9912
  %10804 = vmatpush.msra.mxu0 %v9904
  %10805 = vmatpush.msra.mxu0 %v9896
  %10806 = vmatpush.msra.mxu0 %v9888
  %10807 = vmatpush.msra.mxu0 %v9880
  %10808 = vmatpush.msra.mxu0 %v9872
  %10809 = vmatpush.msra.mxu0 %v9864
  %10810 = vmatpush.msra.mxu0 %v9856
  %10811 = vmatpush.msra.mxu0 %v9848
  %10812 = vmatpush.msra.mxu0 %v9840
  %10813 = vmatmul.f32.gmra.mxu0 %v9693
  %v10814 = vpop.f32.mrf.mxu0
  %v10815 = vadd.f32 %v10795, %v10814
  %10816 = vdwg.mxu0
  %10817 = vmatpush.msra.mxu0 %v10088
  %10818 = vmatpush.msra.mxu0 %v10080
  %10819 = vmatpush.msra.mxu0 %v10072
  %10820 = vmatpush.msra.mxu0 %v10064
  %10821 = vmatpush.msra.mxu0 %v10056
  %10822 = vmatpush.msra.mxu0 %v10048
  %10823 = vmatpush.msra.mxu0 %v10040
  %10824 = vmatpush.msra.mxu0 %v10032
  %10825 = vmatpush.msra.mxu0 %v10024
  %10826 = vmatpush.msra.mxu0 %v10016
  %10827 = vmatpush.msra.mxu0 %v10008
  %10828 = vmatpush.msra.mxu0 %v10000
  %10829 = vmatpush.msra.mxu0 %v9992
  %10830 = vmatpush.msra.mxu0 %v9984
  %10831 = vmatpush.msra.mxu0 %v9976
  %10832 = vmatpush.msra.mxu0 %v9968
  %10833 = vmatmul.f32.gmra.mxu0 %v9694
  %v10834 = vpop.f32.mrf.mxu0
  %v10835 = vadd.f32 %v10815, %v10834
  %10836 = vdwg.mxu0
  %10837 = vmatpush.msra.mxu0 %v10216
  %10838 = vmatpush.msra.mxu0 %v10208
  %10839 = vmatpush.msra.mxu0 %v10200
  %10840 = vmatpush.msra.mxu0 %v10192
  %10841 = vmatpush.msra.mxu0 %v10184
  %10842 = vmatpush.msra.mxu0 %v10176
  %10843 = vmatpush.msra.mxu0 %v10168
  %10844 = vmatpush.msra.mxu0 %v10160
  %10845 = vmatpush.msra.mxu0 %v10152
  %10846 = vmatpush.msra.mxu0 %v10144
  %10847 = vmatpush.msra.mxu0 %v10136
  %10848 = vmatpush.msra.mxu0 %v10128
  %10849 = vmatpush.msra.mxu0 %v10120
  %10850 = vmatpush.msra.mxu0 %v10112
  %10851 = vmatpush.msra.mxu0 %v10104
  %10852 = vmatpush.msra.mxu0 %v10096
  %10853 = vmatmul.f32.gmra.mxu0 %v9695
  %v10854 = vpop.f32.mrf.mxu0
  %v10855 = vadd.f32 %v10835, %v10854
  %10856 = vdwg.mxu0
  %v10857 = vadd.f32 %v9697, %v10295
  %v10858 = vadd.f32 %v9698, %v10375
  %v10859 = vadd.f32 %v9699, %v10455
  %v10860 = vadd.f32 %v9700, %v10535
  %v10861 = vadd.f32 %v9701, %v10615
  %v10862 = vadd.f32 %v9702, %v10695
  %v10863 = vadd.f32 %v9703, %v10775
  %v10864 = vadd.f32 %v9704, %v10855
  %v10865 = vxor.u32 %v10857, 2147483648
  %v10866 = vxor.u32 %v10858, 2147483648
  %v10867 = vxor.u32 %v10859, 2147483648
  %v10868 = vxor.u32 %v10860, 2147483648
  %v10869 = vxor.u32 %v10861, 2147483648
  %v10870 = vxor.u32 %v10862, 2147483648
  %v10871 = vmul.f32 %v10865, 1.442695
  %v10872 = vpow.pop %v10871
  %v10873 = vmul.f32 %v10866, 1.442695
  %v10874 = vpow.pop %v10873
  %v10875 = vmul.f32 %v10867, 1.442695
  %v10876 = vpow.pop %v10875
  %v10877 = vmul.f32 %v10868, 1.442695
  %v10878 = vpow.pop %v10877
  %v10879 = vmul.f32 %v10869, 1.442695
  %v10880 = vpow.pop %v10879
  %v10881 = vmul.f32 %v10870, 1.442695
  %v10882 = vpow.pop %v10881
  %v10883 = vadd.f32 %v10872, 1.0
  %v10884 = vadd.f32 %v10874, 1.0
  %v10885 = vadd.f32 %v10876, 1.0
  %v10886 = vadd.f32 %v10878, 1.0
  %v10887 = vadd.f32 %v10880, 1.0
  %v10888 = vadd.f32 %v10882, 1.0
  %v10889 = vrcp.pop %v10883
  %v10890 = vmul.f32 %v10883, %v10889
  %v10891 = vsub.f32 1.0, %v10890
  %v10892 = vmul.f32 %v10889, %v10891
  %v10893 = vadd.f32 %v10889, %v10892
  %vm10894 = vweird.f32 %v10883
  %vm10895 = vweird.f32 %v10889
  %vm10896 = vmor %vm10894, %vm10895
  %v10897 = vsel %vm10896, %v10889, %v10893
  %v10898 = vand.u32 2147483647, %v10883
  %vm10899 = vcmp.eq.f32.partialorder %v10898, 8.507059e+37
  %v10900 = vand.u32 %v10883, 2147483648
  %v10901 = vor.u32 1.1754944e-38, %v10900
  %v10902 = vsel %vm10899, %v10901, %v10897
  %v10903 = vmul.f32 1.0, %v10902
  %v10904 = vrcp.pop %v10884
  %v10905 = vmul.f32 %v10884, %v10904
  %v10906 = vsub.f32 1.0, %v10905
  %v10907 = vmul.f32 %v10904, %v10906
  %v10908 = vadd.f32 %v10904, %v10907
  %vm10909 = vweird.f32 %v10884
  %vm10910 = vweird.f32 %v10904
  %vm10911 = vmor %vm10909, %vm10910
  %v10912 = vsel %vm10911, %v10904, %v10908
  %v10913 = vand.u32 2147483647, %v10884
  %vm10914 = vcmp.eq.f32.partialorder %v10913, 8.507059e+37
  %v10915 = vand.u32 %v10884, 2147483648
  %v10916 = vor.u32 1.1754944e-38, %v10915
  %v10917 = vsel %vm10914, %v10916, %v10912
  %v10918 = vmul.f32 1.0, %v10917
  %v10919 = vrcp.pop %v10885
  %v10920 = vmul.f32 %v10885, %v10919
  %v10921 = vsub.f32 1.0, %v10920
  %v10922 = vmul.f32 %v10919, %v10921
  %v10923 = vadd.f32 %v10919, %v10922
  %vm10924 = vweird.f32 %v10885
  %vm10925 = vweird.f32 %v10919
  %vm10926 = vmor %vm10924, %vm10925
  %v10927 = vsel %vm10926, %v10919, %v10923
  %v10928 = vand.u32 2147483647, %v10885
  %vm10929 = vcmp.eq.f32.partialorder %v10928, 8.507059e+37
  %v10930 = vand.u32 %v10885, 2147483648
  %v10931 = vor.u32 1.1754944e-38, %v10930
  %v10932 = vsel %vm10929, %v10931, %v10927
  %v10933 = vmul.f32 1.0, %v10932
  %v10934 = vrcp.pop %v10886
  %v10935 = vmul.f32 %v10886, %v10934
  %v10936 = vsub.f32 1.0, %v10935
  %v10937 = vmul.f32 %v10934, %v10936
  %v10938 = vadd.f32 %v10934, %v10937
  %vm10939 = vweird.f32 %v10886
  %vm10940 = vweird.f32 %v10934
  %vm10941 = vmor %vm10939, %vm10940
  %v10942 = vsel %vm10941, %v10934, %v10938
  %v10943 = vand.u32 2147483647, %v10886
  %vm10944 = vcmp.eq.f32.partialorder %v10943, 8.507059e+37
  %v10945 = vand.u32 %v10886, 2147483648
  %v10946 = vor.u32 1.1754944e-38, %v10945
  %v10947 = vsel %vm10944, %v10946, %v10942
  %v10948 = vmul.f32 1.0, %v10947
  %v10949 = vrcp.pop %v10887
  %v10950 = vmul.f32 %v10887, %v10949
  %v10951 = vsub.f32 1.0, %v10950
  %v10952 = vmul.f32 %v10949, %v10951
  %v10953 = vadd.f32 %v10949, %v10952
  %vm10954 = vweird.f32 %v10887
  %vm10955 = vweird.f32 %v10949
  %vm10956 = vmor %vm10954, %vm10955
  %v10957 = vsel %vm10956, %v10949, %v10953
  %v10958 = vand.u32 2147483647, %v10887
  %vm10959 = vcmp.eq.f32.partialorder %v10958, 8.507059e+37
  %v10960 = vand.u32 %v10887, 2147483648
  %v10961 = vor.u32 1.1754944e-38, %v10960
  %v10962 = vsel %vm10959, %v10961, %v10957
  %v10963 = vmul.f32 1.0, %v10962
  %v10964 = vrcp.pop %v10888
  %v10965 = vmul.f32 %v10888, %v10964
  %v10966 = vsub.f32 1.0, %v10965
  %v10967 = vmul.f32 %v10964, %v10966
  %v10968 = vadd.f32 %v10964, %v10967
  %vm10969 = vweird.f32 %v10888
  %vm10970 = vweird.f32 %v10964
  %vm10971 = vmor %vm10969, %vm10970
  %v10972 = vsel %vm10971, %v10964, %v10968
  %v10973 = vand.u32 2147483647, %v10888
  %vm10974 = vcmp.eq.f32.partialorder %v10973, 8.507059e+37
  %v10975 = vand.u32 %v10888, 2147483648
  %v10976 = vor.u32 1.1754944e-38, %v10975
  %v10977 = vsel %vm10974, %v10976, %v10972
  %v10978 = vmul.f32 1.0, %v10977
  %v10979 = vtanh.pop %v10863
  %v10980 = vtanh.pop %v10864
  %v10981 = vmul.f32 %v10933, %v9680
  %v10982 = vmul.f32 %v10948, %v9681
  %v10983 = vmul.f32 %v10903, %v10979
  %v10984 = vmul.f32 %v10918, %v10980
  %v10985 = vadd.f32 %v10981, %v10983
  %v10986 = vadd.f32 %v10982, %v10984
  %v10987 = vtanh.pop %v10985
  %v10988 = vtanh.pop %v10986
  %v10989 = vmul.f32 %v10963, %v10987
  %v10990 = vmul.f32 %v10978, %v10988
  %s10991 = scalar_lea.vmem [#allocation3], 112
  %10992 = vst [vmem:[%s10991] sm:$0xff] %v10989
  %10993 = vst [vmem:[%s10991 + $0x8] sm:$0xff] %v10990
  %10994 = vst [vmem:[#allocation4] sm:$0xff] %v10989
  %10995 = vst [vmem:[#allocation4 + $0x8] sm:$0xff] %v10990
  %v10996 = vld [vmem:[#allocation3] sm:$0xff]
  %v10997 = vld [vmem:[#allocation3 + $0x8] sm:$0xff]
  %v10998 = vld [vmem:[#allocation3 + $0x10] sm:$0xff]
  %v10999 = vld [vmem:[#allocation3 + $0x18] sm:$0xff]
  %v11000 = vld [vmem:[#allocation3 + $0x20] sm:$0xff]
  %v11001 = vld [vmem:[#allocation3 + $0x28] sm:$0xff]
  %v11002 = vld [vmem:[#allocation3 + $0x30] sm:$0xff]
  %v11003 = vld [vmem:[#allocation3 + $0x38] sm:$0xff]
  %v11004 = vld [vmem:[#allocation3 + $0x40] sm:$0xff]
  %v11005 = vld [vmem:[#allocation3 + $0x48] sm:$0xff]
  %v11006 = vld [vmem:[#allocation3 + $0x50] sm:$0xff]
  %v11007 = vld [vmem:[#allocation3 + $0x58] sm:$0xff]
  %v11008 = vld [vmem:[#allocation3 + $0x60] sm:$0xff]
  %v11009 = vld [vmem:[#allocation3 + $0x68] sm:$0xff]
  %v11010 = vld [vmem:[#allocation3 + $0x70] sm:$0xff]
  %v11011 = vld [vmem:[#allocation3 + $0x78] sm:$0xff]
  %v11012 = vld [vmem:[#allocation4] sm:$0xff]
  %v11013 = vld [vmem:[#allocation4 + $0x8] sm:$0xff]
  %v11014 = vld [vmem:[#allocation4 + $0x10] sm:$0xff]
  %v11015 = vld [vmem:[#allocation4 + $0x18] sm:$0xff]
  %v11016 = vld [vmem:[#allocation4 + $0x20] sm:$0xff]
  %v11017 = vld [vmem:[#allocation4 + $0x28] sm:$0xff]
  %v11018 = vld [vmem:[#allocation4 + $0x30] sm:$0xff]
  %v11019 = vld [vmem:[#allocation4 + $0x38] sm:$0xff]
  %v11020 = vld [vmem:[#allocation4 + $0x40] sm:$0xff]
  %v11021 = vld [vmem:[#allocation4 + $0x48] sm:$0xff]
  %v11022 = vld [vmem:[#allocation4 + $0x50] sm:$0xff]
  %v11023 = vld [vmem:[#allocation4 + $0x58] sm:$0xff]
  %v11024 = vld [vmem:[#allocation4 + $0x60] sm:$0xff]
  %v11025 = vld [vmem:[#allocation4 + $0x68] sm:$0xff]
  %v11026 = vld [vmem:[#allocation4 + $0x70] sm:$0xff]
  %v11027 = vld [vmem:[#allocation4 + $0x78] sm:$0xff]
  %v11028 = vld [vmem:[%s3] sm:$0xff]
  %v11029 = vld [vmem:[%s3 + $0x8] sm:$0xff]
  %v11030 = vld [vmem:[%s3 + $0x10] sm:$0xff]
  %v11031 = vld [vmem:[%s3 + $0x18] sm:$0xff]
  %v11032 = vld [vmem:[%s3 + $0x20] sm:$0xff]
  %v11033 = vld [vmem:[%s3 + $0x28] sm:$0xff]
  %v11034 = vld [vmem:[%s3 + $0x30] sm:$0xff]
  %v11035 = vld [vmem:[%s3 + $0x38] sm:$0xff]
  %v11036 = vld [vmem:[%s3 + $0x40] sm:$0xff]
  %v11037 = vld [vmem:[%s3 + $0x48] sm:$0xff]
  %v11038 = vld [vmem:[%s3 + $0x50] sm:$0xff]
  %v11039 = vld [vmem:[%s3 + $0x58] sm:$0xff]
  %v11040 = vld [vmem:[%s3 + $0x60] sm:$0xff]
  %v11041 = vld [vmem:[%s3 + $0x68] sm:$0xff]
  %v11042 = vld [vmem:[%s3 + $0x70] sm:$0xff]
  %v11043 = vld [vmem:[%s3 + $0x78] sm:$0xff]
  %v11044 = vld [vmem:[%s3 + $0x80] sm:$0xff]
  %v11045 = vld [vmem:[%s3 + $0x88] sm:$0xff]
  %v11046 = vld [vmem:[%s3 + $0x90] sm:$0xff]
  %v11047 = vld [vmem:[%s3 + $0x98] sm:$0xff]
  %v11048 = vld [vmem:[%s3 + $0xa0] sm:$0xff]
  %v11049 = vld [vmem:[%s3 + $0xa8] sm:$0xff]
  %v11050 = vld [vmem:[%s3 + $0xb0] sm:$0xff]
  %v11051 = vld [vmem:[%s3 + $0xb8] sm:$0xff]
  %v11052 = vld [vmem:[%s3 + $0xc0] sm:$0xff]
  %v11053 = vld [vmem:[%s3 + $0xc8] sm:$0xff]
  %v11054 = vld [vmem:[%s3 + $0xd0] sm:$0xff]
  %v11055 = vld [vmem:[%s3 + $0xd8] sm:$0xff]
  %v11056 = vld [vmem:[%s3 + $0xe0] sm:$0xff]
  %v11057 = vld [vmem:[%s3 + $0xe8] sm:$0xff]
  %v11058 = vld [vmem:[%s3 + $0xf0] sm:$0xff]
  %v11059 = vld [vmem:[%s3 + $0xf8] sm:$0xff]
  %v11060 = vld [vmem:[%s4] sm:$0xff]
  %v11061 = vld [vmem:[%s4 + $0x8] sm:$0xff]
  %v11062 = vld [vmem:[%s4 + $0x10] sm:$0xff]
  %v11063 = vld [vmem:[%s4 + $0x18] sm:$0xff]
  %v11064 = vld [vmem:[%s4 + $0x20] sm:$0xff]
  %v11065 = vld [vmem:[%s4 + $0x28] sm:$0xff]
  %v11066 = vld [vmem:[%s4 + $0x30] sm:$0xff]
  %v11067 = vld [vmem:[%s4 + $0x38] sm:$0xff]
  %v11068 = vld [vmem:[%s4 + $0x40] sm:$0xff]
  %v11069 = vld [vmem:[%s4 + $0x48] sm:$0xff]
  %v11070 = vld [vmem:[%s4 + $0x50] sm:$0xff]
  %v11071 = vld [vmem:[%s4 + $0x58] sm:$0xff]
  %v11072 = vld [vmem:[%s4 + $0x60] sm:$0xff]
  %v11073 = vld [vmem:[%s4 + $0x68] sm:$0xff]
  %v11074 = vld [vmem:[%s4 + $0x70] sm:$0xff]
  %v11075 = vld [vmem:[%s4 + $0x78] sm:$0xff]
  %v11076 = vld [vmem:[%s4 + $0x80] sm:$0xff]
  %v11077 = vld [vmem:[%s4 + $0x88] sm:$0xff]
  %v11078 = vld [vmem:[%s4 + $0x90] sm:$0xff]
  %v11079 = vld [vmem:[%s4 + $0x98] sm:$0xff]
  %v11080 = vld [vmem:[%s4 + $0xa0] sm:$0xff]
  %v11081 = vld [vmem:[%s4 + $0xa8] sm:$0xff]
  %v11082 = vld [vmem:[%s4 + $0xb0] sm:$0xff]
  %v11083 = vld [vmem:[%s4 + $0xb8] sm:$0xff]
  %v11084 = vld [vmem:[%s4 + $0xc0] sm:$0xff]
  %v11085 = vld [vmem:[%s4 + $0xc8] sm:$0xff]
  %v11086 = vld [vmem:[%s4 + $0xd0] sm:$0xff]
  %v11087 = vld [vmem:[%s4 + $0xd8] sm:$0xff]
  %v11088 = vld [vmem:[%s4 + $0xe0] sm:$0xff]
  %v11089 = vld [vmem:[%s4 + $0xe8] sm:$0xff]
  %v11090 = vld [vmem:[%s4 + $0xf0] sm:$0xff]
  %v11091 = vld [vmem:[%s4 + $0xf8] sm:$0xff]
  %11092 = vmatpush.msra.mxu0 %v11075
  %11093 = vmatpush.msra.mxu0 %v11074
  %11094 = vmatpush.msra.mxu0 %v11073
  %11095 = vmatpush.msra.mxu0 %v11072
  %11096 = vmatpush.msra.mxu0 %v11071
  %11097 = vmatpush.msra.mxu0 %v11070
  %11098 = vmatpush.msra.mxu0 %v11069
  %11099 = vmatpush.msra.mxu0 %v11068
  %11100 = vmatpush.msra.mxu0 %v11067
  %11101 = vmatpush.msra.mxu0 %v11066
  %11102 = vmatpush.msra.mxu0 %v11065
  %11103 = vmatpush.msra.mxu0 %v11064
  %11104 = vmatpush.msra.mxu0 %v11063
  %11105 = vmatpush.msra.mxu0 %v11062
  %11106 = vmatpush.msra.mxu0 %v11061
  %11107 = vmatpush.msra.mxu0 %v11060
  %11108 = vmatmul.f32.gmra.mxu0 %v11012
  %v11109 = vpop.f32.mrf.mxu0
  %v11110 = vadd.f32 0.0, %v11109
  %11111 = vmatmul.f32.gmra.mxu0 %v11014
  %v11112 = vpop.f32.mrf.mxu0
  %v11113 = vadd.f32 0.0, %v11112
  %11114 = vmatmul.f32.gmra.mxu0 %v11016
  %v11115 = vpop.f32.mrf.mxu0
  %v11116 = vadd.f32 0.0, %v11115
  %11117 = vmatmul.f32.gmra.mxu0 %v11018
  %v11118 = vpop.f32.mrf.mxu0
  %v11119 = vadd.f32 0.0, %v11118
  %11120 = vmatmul.f32.gmra.mxu0 %v11020
  %v11121 = vpop.f32.mrf.mxu0
  %v11122 = vadd.f32 0.0, %v11121
  %11123 = vmatmul.f32.gmra.mxu0 %v11022
  %v11124 = vpop.f32.mrf.mxu0
  %v11125 = vadd.f32 0.0, %v11124
  %11126 = vmatmul.f32.gmra.mxu0 %v11024
  %v11127 = vpop.f32.mrf.mxu0
  %v11128 = vadd.f32 0.0, %v11127
  %11129 = vmatmul.f32.gmra.mxu0 %v11026
  %v11130 = vpop.f32.mrf.mxu0
  %v11131 = vadd.f32 0.0, %v11130
  %11132 = vdwg.mxu0
  %11133 = vmatpush.msra.mxu0 %v11091
  %11134 = vmatpush.msra.mxu0 %v11090
  %11135 = vmatpush.msra.mxu0 %v11089
  %11136 = vmatpush.msra.mxu0 %v11088
  %11137 = vmatpush.msra.mxu0 %v11087
  %11138 = vmatpush.msra.mxu0 %v11086
  %11139 = vmatpush.msra.mxu0 %v11085
  %11140 = vmatpush.msra.mxu0 %v11084
  %11141 = vmatpush.msra.mxu0 %v11083
  %11142 = vmatpush.msra.mxu0 %v11082
  %11143 = vmatpush.msra.mxu0 %v11081
  %11144 = vmatpush.msra.mxu0 %v11080
  %11145 = vmatpush.msra.mxu0 %v11079
  %11146 = vmatpush.msra.mxu0 %v11078
  %11147 = vmatpush.msra.mxu0 %v11077
  %11148 = vmatpush.msra.mxu0 %v11076
  %11149 = vmatmul.f32.gmra.mxu0 %v11013
  %v11150 = vpop.f32.mrf.mxu0
  %v11151 = vadd.f32 %v11110, %v11150
  %11152 = vmatmul.f32.gmra.mxu0 %v11015
  %v11153 = vpop.f32.mrf.mxu0
  %v11154 = vadd.f32 %v11113, %v11153
  %11155 = vmatmul.f32.gmra.mxu0 %v11017
  %v11156 = vpop.f32.mrf.mxu0
  %v11157 = vadd.f32 %v11116, %v11156
  %11158 = vmatmul.f32.gmra.mxu0 %v11019
  %v11159 = vpop.f32.mrf.mxu0
  %v11160 = vadd.f32 %v11119, %v11159
  %11161 = vmatmul.f32.gmra.mxu0 %v11021
  %v11162 = vpop.f32.mrf.mxu0
  %v11163 = vadd.f32 %v11122, %v11162
  %11164 = vmatmul.f32.gmra.mxu0 %v11023
  %v11165 = vpop.f32.mrf.mxu0
  %v11166 = vadd.f32 %v11125, %v11165
  %11167 = vmatmul.f32.gmra.mxu0 %v11025
  %v11168 = vpop.f32.mrf.mxu0
  %v11169 = vadd.f32 %v11128, %v11168
  %11170 = vmatmul.f32.gmra.mxu0 %v11027
  %v11171 = vpop.f32.mrf.mxu0
  %v11172 = vadd.f32 %v11131, %v11171
  %11173 = vdwg.mxu0
  %vm11182 = vcmask 1045504
  %v11183 = vrot.slane %v11151, 2
  %v11184 = vrot.slane %v11154, 2
  %v11185 = vsel %vm11182, %v11183, %v11184
  %v11186 = vrot.slane %v11157, 2
  %v11187 = vsel %vm11182, %v11184, %v11186
  %v11188 = vrot.slane %v11160, 2
  %v11189 = vsel %vm11182, %v11186, %v11188
  %v11190 = vrot.slane %v11163, 2
  %v11191 = vsel %vm11182, %v11188, %v11190
  %v11192 = vrot.slane %v11166, 2
  %v11193 = vsel %vm11182, %v11190, %v11192
  %v11194 = vrot.slane %v11169, 2
  %v11195 = vsel %vm11182, %v11192, %v11194
  %v11196 = vrot.slane %v11172, 2
  %v11197 = vsel %vm11182, %v11194, %v11196
  %v11207 = vsel %vm11182, %v11196, %v11183
  %11208 = vmatpush.msra.mxu0 %v11043
  %11209 = vmatpush.msra.mxu0 %v11042
  %11210 = vmatpush.msra.mxu0 %v11041
  %11211 = vmatpush.msra.mxu0 %v11040
  %11212 = vmatpush.msra.mxu0 %v11039
  %11213 = vmatpush.msra.mxu0 %v11038
  %11214 = vmatpush.msra.mxu0 %v11037
  %11215 = vmatpush.msra.mxu0 %v11036
  %11216 = vmatpush.msra.mxu0 %v11035
  %11217 = vmatpush.msra.mxu0 %v11034
  %11218 = vmatpush.msra.mxu0 %v11033
  %11219 = vmatpush.msra.mxu0 %v11032
  %11220 = vmatpush.msra.mxu0 %v11031
  %11221 = vmatpush.msra.mxu0 %v11030
  %11222 = vmatpush.msra.mxu0 %v11029
  %11223 = vmatpush.msra.mxu0 %v11028
  %11224 = vmatmul.f32.gmra.mxu0 %v10996
  %v11225 = vpop.f32.mrf.mxu0
  %v11226 = vadd.f32 %v11185, %v11225
  %11227 = vmatmul.f32.gmra.mxu0 %v10998
  %v11228 = vpop.f32.mrf.mxu0
  %v11229 = vadd.f32 %v11187, %v11228
  %11230 = vmatmul.f32.gmra.mxu0 %v11000
  %v11231 = vpop.f32.mrf.mxu0
  %v11232 = vadd.f32 %v11189, %v11231
  %11233 = vmatmul.f32.gmra.mxu0 %v11002
  %v11234 = vpop.f32.mrf.mxu0
  %v11235 = vadd.f32 %v11191, %v11234
  %11236 = vmatmul.f32.gmra.mxu0 %v11004
  %v11237 = vpop.f32.mrf.mxu0
  %v11238 = vadd.f32 %v11193, %v11237
  %11239 = vmatmul.f32.gmra.mxu0 %v11006
  %v11240 = vpop.f32.mrf.mxu0
  %v11241 = vadd.f32 %v11195, %v11240
  %11242 = vmatmul.f32.gmra.mxu0 %v11008
  %v11243 = vpop.f32.mrf.mxu0
  %v11244 = vadd.f32 %v11197, %v11243
  %11245 = vmatmul.f32.gmra.mxu0 %v11010
  %v11246 = vpop.f32.mrf.mxu0
  %v11247 = vadd.f32 %v11207, %v11246
  %11248 = vdwg.mxu0
  %11249 = vmatpush.msra.mxu0 %v11059
  %11250 = vmatpush.msra.mxu0 %v11058
  %11251 = vmatpush.msra.mxu0 %v11057
  %11252 = vmatpush.msra.mxu0 %v11056
  %11253 = vmatpush.msra.mxu0 %v11055
  %11254 = vmatpush.msra.mxu0 %v11054
  %11255 = vmatpush.msra.mxu0 %v11053
  %11256 = vmatpush.msra.mxu0 %v11052
  %11257 = vmatpush.msra.mxu0 %v11051
  %11258 = vmatpush.msra.mxu0 %v11050
  %11259 = vmatpush.msra.mxu0 %v11049
  %11260 = vmatpush.msra.mxu0 %v11048
  %11261 = vmatpush.msra.mxu0 %v11047
  %11262 = vmatpush.msra.mxu0 %v11046
  %11263 = vmatpush.msra.mxu0 %v11045
  %11264 = vmatpush.msra.mxu0 %v11044
  %11265 = vmatmul.f32.gmra.mxu0 %v10997
  %v11266 = vpop.f32.mrf.mxu0
  %v11267 = vadd.f32 %v11226, %v11266
  %11268 = vmatmul.f32.gmra.mxu0 %v10999
  %v11269 = vpop.f32.mrf.mxu0
  %v11270 = vadd.f32 %v11229, %v11269
  %11271 = vmatmul.f32.gmra.mxu0 %v11001
  %v11272 = vpop.f32.mrf.mxu0
  %v11273 = vadd.f32 %v11232, %v11272
  %11274 = vmatmul.f32.gmra.mxu0 %v11003
  %v11275 = vpop.f32.mrf.mxu0
  %v11276 = vadd.f32 %v11235, %v11275
  %11277 = vmatmul.f32.gmra.mxu0 %v11005
  %v11278 = vpop.f32.mrf.mxu0
  %v11279 = vadd.f32 %v11238, %v11278
  %11280 = vmatmul.f32.gmra.mxu0 %v11007
  %v11281 = vpop.f32.mrf.mxu0
  %v11282 = vadd.f32 %v11241, %v11281
  %11283 = vmatmul.f32.gmra.mxu0 %v11009
  %v11284 = vpop.f32.mrf.mxu0
  %v11285 = vadd.f32 %v11244, %v11284
  %11286 = vmatmul.f32.gmra.mxu0 %v11011
  %v11287 = vpop.f32.mrf.mxu0
  %v11288 = vadd.f32 %v11247, %v11287
  %11289 = vdwg.mxu0
  %v11290 = vld [vmem:[%s5] sm:$0x1]
  %v11292 = vperm.slane %v11290, 0
  %v11294 = vadd.f32 %v11267, %v11292
  %v11295 = vadd.f32 %v11270, %v11292
  %v11296 = vadd.f32 %v11273, %v11292
  %v11297 = vadd.f32 %v11276, %v11292
  %v11298 = vadd.f32 %v11279, %v11292
  %v11299 = vadd.f32 %v11282, %v11292
  %v11300 = vadd.f32 %v11285, %v11292
  %v11301 = vadd.f32 %v11288, %v11292
  %vm11302 = vcmask 261120
  %11303 = vst.msk [vmem:[%s6] sm:$0xff] %vm11302, %v11294
  %11304 = vst.msk [vmem:[%s6 + $0x8] sm:$0xff] %vm11302, %v11295
  %11305 = vst.msk [vmem:[%s6 + $0x10] sm:$0xff] %vm11302, %v11296
  %11306 = vst.msk [vmem:[%s6 + $0x18] sm:$0xff] %vm11302, %v11297
  %11307 = vst.msk [vmem:[%s6 + $0x20] sm:$0xff] %vm11302, %v11298
  %11308 = vst.msk [vmem:[%s6 + $0x28] sm:$0xff] %vm11302, %v11299
  %11309 = vst.msk [vmem:[%s6 + $0x30] sm:$0xff] %vm11302, %v11300
  %11310 = vst.msk [vmem:[%s6 + $0x38] sm:$0xff] %vm11302, %v11301
  // Predicated region
  $region26: #{lstm_bidir_dense.1} parent=0 // pred_check
    _
  $region27: #{lstm_bidir_dense.1} parent=0 // pred_check_branch
    %11312 = sbr.rel (0) target = $region29
  $region28: #{lstm_bidir_dense.1} parent=0 // pred_region
    _
  $region29: #{lstm_bidir_dense.1} parent=0 // pred_fallthru
    _
  // Predicated region
  $region30: #{lstm_bidir_dense.1} parent=0 // pred_check
    _
  $region31: #{lstm_bidir_dense.1} parent=0 // pred_check_branch
    %11314 = sbr.rel (0) target = $region33
  $region32: #{lstm_bidir_dense.1} parent=0 // pred_region
    _
  $region33: #{lstm_bidir_dense.1} parent=0 // pred_fallthru
    _

</llo_original>
